<compile_context>
chip_gen: v7x
topology: tpu7x:2x2x1
jax: 0.10.0
libtpu: 0.0.40
codegen_flags: <defaults>
</compile_context>

<pallas_src>
import jax
import jax.numpy as jnp
from jax.experimental import pallas as pl
from jax.experimental.pallas import tpu as pltpu

_EPS = 1e-5


def _conv3x3_from_padded(pad_ref, w_ref, N, H, W, Cin, Cout):
    """3x3 / stride-1 conv on a zero-padded (N, H+2, W+2, Cin) VMEM ref.

    Computed as 9 shifted (M, Cin) @ (Cin, Cout) matmuls accumulated in f32 -- the in-kernel
    equivalent of im2col + matmul without ever materializing the (M, 9*Cin) patch tensor.
    w_ref is (9, Cin, Cout) in (dy*3 + dx) tap order.
    """
    M = N * H * W
    acc = jnp.zeros((M, Cout), jnp.float32)
    for dy in range(3):
        for dx in range(3):
            tap = pad_ref[:, dy:dy + H, dx:dx + W, :].reshape(M, Cin)
            acc = acc + jnp.dot(tap, w_ref[dy * 3 + dx],
                                preferred_element_type=jnp.float32)
    return acc


def _bn_scale_shift(acc, g, b, inv_m):
    """Batch-stat BatchNorm folded to one per-channel FMA: y = acc * scale + shift."""
    s = jnp.sum(acc, axis=0, keepdims=True)
    q = jnp.sum(acc * acc, axis=0, keepdims=True)
    mean = s * inv_m
    var = q * inv_m - mean * mean            # biased variance, E[x^2] - E[x]^2
    scale = g * jax.lax.rsqrt(var + _EPS)
    shift = b - mean * scale
    return scale, shift


def _resblock_kernel(x_ref, w1_ref, g1_ref, b1_ref, w2_ref, g2_ref, b2_ref,
                     o_ref, pad_ref):
    N, H, W, C = x_ref.shape
    Cout = o_ref.shape[1]
    M = N * H * W
    inv_m = 1.0 / M

    # Zero the halo once; the interior is (over)written before every use, and the same padded
    # scratch is reused for conv1's input (x) and conv2's input (h) since Cin == Cout.
    pad_ref[...] = jnp.zeros_like(pad_ref)
    pad_ref[:, 1:1 + H, 1:1 + W, :] = x_ref[...]

    # conv1 -> BN1 (folded FMA) -> ReLU
    a1 = _conv3x3_from_padded(pad_ref, w1_ref, N, H, W, C, Cout)
    sc1, sh1 = _bn_scale_shift(a1, g1_ref[...], b1_ref[...], inv_m)
    h = jnp.maximum(a1 * sc1 + sh1, 0.0)                      # (M, Cout), never leaves VMEM

    # Reuse the padded scratch for the intermediate activation (border is still zero).
    pad_ref[:, 1:1 + H, 1:1 + W, :] = h.reshape(N, H, W, Cout)

    # conv2 -> BN2 (folded FMA) -> + identity residual -> ReLU
    a2 = _conv3x3_from_padded(pad_ref, w2_ref, N, H, W, Cout, Cout)
    sc2, sh2 = _bn_scale_shift(a2, g2_ref[...], b2_ref[...], inv_m)
    res = x_ref[...].reshape(M, C)
    o_ref[...] = jnp.maximum(a2 * sc2 + sh2 + res, 0.0)


def _vmem_spec():
    return pl.BlockSpec(memory_space=pltpu.MemorySpace.VMEM)


def res_block_x(x_nchw, params):
    """Forward pass of ResBlock_x. x_nchw: (N, C, H, W) float32; weights in (kh,kw,Ci,Co) layout."""
    w1, g1, b1, w2, g2, b2 = params
    N, C, H, W = x_nchw.shape
    Cout = w1.shape[-1]
    if Cout != C:
        raise ValueError("identity residual requires in_ch == out_ch")
    M = N * H * W

    # Loud guard instead of a silent VMEM OOM; fused batch-stat BN needs the block resident.
    # TODO(synk): add an M-tiled, two-pass-BN pipelined variant for inputs that exceed VMEM.
    est_bytes = 4 * (2 * M * C + 6 * M * Cout + N * (H + 2) * (W + 2) * C)
    if est_bytes > 40 * 1024 * 1024:
        raise ValueError(
            f"input too large for the fused single-block kernel (~{est_bytes} B of VMEM needed)")

    x = jnp.transpose(x_nchw, (0, 2, 3, 1)).astype(jnp.float32)   # NHWC (layout glue only)

    out2d = pl.pallas_call(
        _resblock_kernel,
        out_shape=jax.ShapeDtypeStruct((M, Cout), jnp.float32),
        in_specs=[_vmem_spec()] * 7,
        out_specs=_vmem_spec(),
        scratch_shapes=[
            pltpu.VMEM((N, H + 2, W + 2, C), jnp.float32),   # shared zero-padded scratch (x, then h)
        ],
        compiler_params=pltpu.CompilerParams(vmem_limit_bytes=32 * 1024 * 1024),
    )(x,
      w1.reshape(9, C, Cout).astype(jnp.float32),
      g1.reshape(1, Cout).astype(jnp.float32),
      b1.reshape(1, Cout).astype(jnp.float32),
      w2.reshape(9, Cout, Cout).astype(jnp.float32),
      g2.reshape(1, Cout).astype(jnp.float32),
      b2.reshape(1, Cout).astype(jnp.float32))

    out = out2d.reshape(N, H, W, Cout)
    return jnp.transpose(out, (0, 3, 1, 2))                       # back to NCHW


# ----- pure-JAX reference (for correctness check only) -----
def _ref_forward(x_nchw, params):
    w1, g1, b1, w2, g2, b2 = params

    def conv(x, w):  # w: (3,3,Ci,Co) -> OIHW
        wk = jnp.transpose(w, (3, 2, 0, 1))
        return jax.lax.conv_general_dilated(
            x, wk, window_strides=(1, 1), padding=((1, 1), (1, 1)),
            dimension_numbers=("NCHW", "OIHW", "NCHW"))

    def bn(x, g, b):
        mean = jnp.mean(x, axis=(0, 2, 3), keepdims=True)
        var = jnp.mean((x - mean) ** 2, axis=(0, 2, 3), keepdims=True)
        return (x - mean) * jax.lax.rsqrt(var + _EPS) * g.reshape(1, -1, 1, 1) + b.reshape(1, -1, 1, 1)

    h = jax.nn.relu(bn(conv(x_nchw, w1), g1, b1))
    o1 = bn(conv(h, w2), g2, b2)
    return jax.nn.relu(o1 + x_nchw)


if __name__ == "__main__":
    key = jax.random.PRNGKey(0)
    k = jax.random.split(key, 7)
    # ResBlock_x with in_ch == out_ch (identity residual requires it), strides=1
    N, C, H, W = 2, 4, 16, 16
    x = jax.random.normal(k[0], (N, C, H, W), jnp.float32)

    w1 = 0.1 * jax.random.normal(k[1], (3, 3, C, C), jnp.float32)   # conv1 weight (kh,kw,Ci,Co)
    w2 = 0.1 * jax.random.normal(k[2], (3, 3, C, C), jnp.float32)   # conv2 weight
    g1 = 1.0 + 0.1 * jax.random.normal(k[3], (C,), jnp.float32)     # BN1 gamma
    b1 = 0.1 * jax.random.normal(k[4], (C,), jnp.float32)           # BN1 beta
    g2 = 1.0 + 0.1 * jax.random.normal(k[5], (C,), jnp.float32)     # BN2 gamma
    b2 = 0.1 * jax.random.normal(k[6], (C,), jnp.float32)           # BN2 beta
    params = (w1, g1, b1, w2, g2, b2)

    out = jax.block_until_ready(res_block_x(x, params))
    ref = jax.block_until_ready(_ref_forward(x, params))

    assert out.shape == (N, C, H, W)
    assert jnp.allclose(out, ref, rtol=1e-3, atol=1e-3), float(jnp.max(jnp.abs(out - ref)))
    print("KERNEL_OK")
</pallas_src>

<mosaic_0001>
module attributes {stable_mosaic.version = 11 : i64} {
  func.func @_resblock_kernel(%arg0: memref<2x16x16x4xf32, #tpu.memory_space<vmem>>, %arg1: memref<9x4x4xf32, #tpu.memory_space<vmem>>, %arg2: memref<1x4xf32, #tpu.memory_space<vmem>>, %arg3: memref<1x4xf32, #tpu.memory_space<vmem>>, %arg4: memref<9x4x4xf32, #tpu.memory_space<vmem>>, %arg5: memref<1x4xf32, #tpu.memory_space<vmem>>, %arg6: memref<1x4xf32, #tpu.memory_space<vmem>>, %arg7: memref<512x4xf32, #tpu.memory_space<vmem>>, %arg8: memref<2x18x18x4xf32, #tpu.memory_space<vmem>>) attributes {dimension_semantics = [], scalar_prefetch = 0 : i64, scratch_operands = 1 : i64, tpu.core_type = #tpu.core_type<tc>} {
    %cst = arith.constant 0.000000e+00 : f32
    %0 = vector.broadcast %cst : f32 to vector<2x18x18x4xf32>
    %c0 = arith.constant 0 : index
    %c0_0 = arith.constant 0 : index
    %c0_1 = arith.constant 0 : index
    %c0_2 = arith.constant 0 : index
    %1 = vector.load %arg8[%c0, %c0_0, %c0_1, %c0_2] : memref<2x18x18x4xf32, #tpu.memory_space<vmem>>, vector<2x18x18x4xf32>
    tpu.vector_store %arg8[%c0, %c0_0, %c0_1, %c0_2], %0 {strides = array<i32>} : memref<2x18x18x4xf32, #tpu.memory_space<vmem>>, vector<2x18x18x4xf32>,
    %c0_3 = arith.constant 0 : index
    %c0_4 = arith.constant 0 : index
    %c0_5 = arith.constant 0 : index
    %c0_6 = arith.constant 0 : index
    %2 = vector.load %arg0[%c0_3, %c0_4, %c0_5, %c0_6] : memref<2x16x16x4xf32, #tpu.memory_space<vmem>>, vector<2x16x16x4xf32>
    %c0_7 = arith.constant 0 : index
    %c1 = arith.constant 1 : index
    %c1_8 = arith.constant 1 : index
    %c0_9 = arith.constant 0 : index
    %3 = vector.load %arg8[%c0_7, %c1, %c1_8, %c0_9] : memref<2x18x18x4xf32, #tpu.memory_space<vmem>>, vector<2x16x16x4xf32>
    tpu.vector_store %arg8[%c0_7, %c1, %c1_8, %c0_9], %2 {strides = array<i32>} : memref<2x18x18x4xf32, #tpu.memory_space<vmem>>, vector<2x16x16x4xf32>,
    %cst_10 = arith.constant 0.000000e+00 : f32
    %4 = vector.broadcast %cst_10 : f32 to vector<512x4xf32>
    %c0_11 = arith.constant 0 : index
    %c0_12 = arith.constant 0 : index
    %c0_13 = arith.constant 0 : index
    %c0_14 = arith.constant 0 : index
    %5 = vector.load %arg8[%c0_11, %c0_12, %c0_13, %c0_14] : memref<2x18x18x4xf32, #tpu.memory_space<vmem>>, vector<2x16x16x4xf32>
    %6 = vector.shape_cast %5 : vector<2x16x16x4xf32> to vector<512x4xf32>
    %c0_15 = arith.constant 0 : index
    %c0_16 = arith.constant 0 : index
    %c0_17 = arith.constant 0 : index
    %7 = vector.load %arg1[%c0_15, %c0_16, %c0_17] : memref<9x4x4xf32, #tpu.memory_space<vmem>>, vector<1x4x4xf32>
    %8 = vector.shape_cast %7 : vector<1x4x4xf32> to vector<4x4xf32>
    %cst_18 = arith.constant dense<0.000000e+00> : vector<512x4xf32>
    %9 = tpu.matmul %6, %8, %cst_18 {dimension_numbers = #tpu.dot_dimension_numbers<[1], [0], [0], [1], [0, 0, 1, 1], [], []>} : vector<512x4xf32>, vector<4x4xf32>, vector<512x4xf32> -> vector<512x4xf32>
    %10 = arith.addf %4, %9 : vector<512x4xf32>
    %c0_19 = arith.constant 0 : index
    %c0_20 = arith.constant 0 : index
    %c1_21 = arith.constant 1 : index
    %c0_22 = arith.constant 0 : index
    %11 = vector.load %arg8[%c0_19, %c0_20, %c1_21, %c0_22] : memref<2x18x18x4xf32, #tpu.memory_space<vmem>>, vector<2x16x16x4xf32>
    %12 = vector.shape_cast %11 : vector<2x16x16x4xf32> to vector<512x4xf32>
    %c1_23 = arith.constant 1 : index
    %c0_24 = arith.constant 0 : index
    %c0_25 = arith.constant 0 : index
    %13 = vector.load %arg1[%c1_23, %c0_24, %c0_25] : memref<9x4x4xf32, #tpu.memory_space<vmem>>, vector<1x4x4xf32>
    %14 = vector.shape_cast %13 : vector<1x4x4xf32> to vector<4x4xf32>
    %cst_26 = arith.constant dense<0.000000e+00> : vector<512x4xf32>
    %15 = tpu.matmul %12, %14, %cst_26 {dimension_numbers = #tpu.dot_dimension_numbers<[1], [0], [0], [1], [0, 0, 1, 1], [], []>} : vector<512x4xf32>, vector<4x4xf32>, vector<512x4xf32> -> vector<512x4xf32>
    %16 = arith.addf %10, %15 : vector<512x4xf32>
    %c0_27 = arith.constant 0 : index
    %c0_28 = arith.constant 0 : index
    %c2 = arith.constant 2 : index
    %c0_29 = arith.constant 0 : index
    %17 = vector.load %arg8[%c0_27, %c0_28, %c2, %c0_29] : memref<2x18x18x4xf32, #tpu.memory_space<vmem>>, vector<2x16x16x4xf32>
    %18 = vector.shape_cast %17 : vector<2x16x16x4xf32> to vector<512x4xf32>
    %c2_30 = arith.constant 2 : index
    %c0_31 = arith.constant 0 : index
    %c0_32 = arith.constant 0 : index
    %19 = vector.load %arg1[%c2_30, %c0_31, %c0_32] : memref<9x4x4xf32, #tpu.memory_space<vmem>>, vector<1x4x4xf32>
    %20 = vector.shape_cast %19 : vector<1x4x4xf32> to vector<4x4xf32>
    %cst_33 = arith.constant dense<0.000000e+00> : vector<512x4xf32>
    %21 = tpu.matmul %18, %20, %cst_33 {dimension_numbers = #tpu.dot_dimension_numbers<[1], [0], [0], [1], [0, 0, 1, 1], [], []>} : vector<512x4xf32>, vector<4x4xf32>, vector<512x4xf32> -> vector<512x4xf32>
    %22 = arith.addf %16, %21 : vector<512x4xf32>
    %c0_34 = arith.constant 0 : index
    %c1_35 = arith.constant 1 : index
    %c0_36 = arith.constant 0 : index
    %c0_37 = arith.constant 0 : index
    %23 = vector.load %arg8[%c0_34, %c1_35, %c0_36, %c0_37] : memref<2x18x18x4xf32, #tpu.memory_space<vmem>>, vector<2x16x16x4xf32>
    %24 = vector.shape_cast %23 : vector<2x16x16x4xf32> to vector<512x4xf32>
    %c3 = arith.constant 3 : index
    %c0_38 = arith.constant 0 : index
    %c0_39 = arith.constant 0 : index
    %25 = vector.load %arg1[%c3, %c0_38, %c0_39] : memref<9x4x4xf32, #tpu.memory_space<vmem>>, vector<1x4x4xf32>
    %26 = vector.shape_cast %25 : vector<1x4x4xf32> to vector<4x4xf32>
    %cst_40 = arith.constant dense<0.000000e+00> : vector<512x4xf32>
    %27 = tpu.matmul %24, %26, %cst_40 {dimension_numbers = #tpu.dot_dimension_numbers<[1], [0], [0], [1], [0, 0, 1, 1], [], []>} : vector<512x4xf32>, vector<4x4xf32>, vector<512x4xf32> -> vector<512x4xf32>
    %28 = arith.addf %22, %27 : vector<512x4xf32>
    %c0_41 = arith.constant 0 : index
    %c1_42 = arith.constant 1 : index
    %c1_43 = arith.constant 1 : index
    %c0_44 = arith.constant 0 : index
    %29 = vector.load %arg8[%c0_41, %c1_42, %c1_43, %c0_44] : memref<2x18x18x4xf32, #tpu.memory_space<vmem>>, vector<2x16x16x4xf32>
    %30 = vector.shape_cast %29 : vector<2x16x16x4xf32> to vector<512x4xf32>
    %c4 = arith.constant 4 : index
    %c0_45 = arith.constant 0 : index
    %c0_46 = arith.constant 0 : index
    %31 = vector.load %arg1[%c4, %c0_45, %c0_46] : memref<9x4x4xf32, #tpu.memory_space<vmem>>, vector<1x4x4xf32>
    %32 = vector.shape_cast %31 : vector<1x4x4xf32> to vector<4x4xf32>
    %cst_47 = arith.constant dense<0.000000e+00> : vector<512x4xf32>
    %33 = tpu.matmul %30, %32, %cst_47 {dimension_numbers = #tpu.dot_dimension_numbers<[1], [0], [0], [1], [0, 0, 1, 1], [], []>} : vector<512x4xf32>, vector<4x4xf32>, vector<512x4xf32> -> vector<512x4xf32>
    %34 = arith.addf %28, %33 : vector<512x4xf32>
    %c0_48 = arith.constant 0 : index
    %c1_49 = arith.constant 1 : index
    %c2_50 = arith.constant 2 : index
    %c0_51 = arith.constant 0 : index
    %35 = vector.load %arg8[%c0_48, %c1_49, %c2_50, %c0_51] : memref<2x18x18x4xf32, #tpu.memory_space<vmem>>, vector<2x16x16x4xf32>
    %36 = vector.shape_cast %35 : vector<2x16x16x4xf32> to vector<512x4xf32>
    %c5 = arith.constant 5 : index
    %c0_52 = arith.constant 0 : index
    %c0_53 = arith.constant 0 : index
    %37 = vector.load %arg1[%c5, %c0_52, %c0_53] : memref<9x4x4xf32, #tpu.memory_space<vmem>>, vector<1x4x4xf32>
    %38 = vector.shape_cast %37 : vector<1x4x4xf32> to vector<4x4xf32>
    %cst_54 = arith.constant dense<0.000000e+00> : vector<512x4xf32>
    %39 = tpu.matmul %36, %38, %cst_54 {dimension_numbers = #tpu.dot_dimension_numbers<[1], [0], [0], [1], [0, 0, 1, 1], [], []>} : vector<512x4xf32>, vector<4x4xf32>, vector<512x4xf32> -> vector<512x4xf32>
    %40 = arith.addf %34, %39 : vector<512x4xf32>
    %c0_55 = arith.constant 0 : index
    %c2_56 = arith.constant 2 : index
    %c0_57 = arith.constant 0 : index
    %c0_58 = arith.constant 0 : index
    %41 = vector.load %arg8[%c0_55, %c2_56, %c0_57, %c0_58] : memref<2x18x18x4xf32, #tpu.memory_space<vmem>>, vector<2x16x16x4xf32>
    %42 = vector.shape_cast %41 : vector<2x16x16x4xf32> to vector<512x4xf32>
    %c6 = arith.constant 6 : index
    %c0_59 = arith.constant 0 : index
    %c0_60 = arith.constant 0 : index
    %43 = vector.load %arg1[%c6, %c0_59, %c0_60] : memref<9x4x4xf32, #tpu.memory_space<vmem>>, vector<1x4x4xf32>
    %44 = vector.shape_cast %43 : vector<1x4x4xf32> to vector<4x4xf32>
    %cst_61 = arith.constant dense<0.000000e+00> : vector<512x4xf32>
    %45 = tpu.matmul %42, %44, %cst_61 {dimension_numbers = #tpu.dot_dimension_numbers<[1], [0], [0], [1], [0, 0, 1, 1], [], []>} : vector<512x4xf32>, vector<4x4xf32>, vector<512x4xf32> -> vector<512x4xf32>
    %46 = arith.addf %40, %45 : vector<512x4xf32>
    %c0_62 = arith.constant 0 : index
    %c2_63 = arith.constant 2 : index
    %c1_64 = arith.constant 1 : index
    %c0_65 = arith.constant 0 : index
    %47 = vector.load %arg8[%c0_62, %c2_63, %c1_64, %c0_65] : memref<2x18x18x4xf32, #tpu.memory_space<vmem>>, vector<2x16x16x4xf32>
    %48 = vector.shape_cast %47 : vector<2x16x16x4xf32> to vector<512x4xf32>
    %c7 = arith.constant 7 : index
    %c0_66 = arith.constant 0 : index
    %c0_67 = arith.constant 0 : index
    %49 = vector.load %arg1[%c7, %c0_66, %c0_67] : memref<9x4x4xf32, #tpu.memory_space<vmem>>, vector<1x4x4xf32>
    %50 = vector.shape_cast %49 : vector<1x4x4xf32> to vector<4x4xf32>
    %cst_68 = arith.constant dense<0.000000e+00> : vector<512x4xf32>
    %51 = tpu.matmul %48, %50, %cst_68 {dimension_numbers = #tpu.dot_dimension_numbers<[1], [0], [0], [1], [0, 0, 1, 1], [], []>} : vector<512x4xf32>, vector<4x4xf32>, vector<512x4xf32> -> vector<512x4xf32>
    %52 = arith.addf %46, %51 : vector<512x4xf32>
    %c0_69 = arith.constant 0 : index
    %c2_70 = arith.constant 2 : index
    %c2_71 = arith.constant 2 : index
    %c0_72 = arith.constant 0 : index
    %53 = vector.load %arg8[%c0_69, %c2_70, %c2_71, %c0_72] : memref<2x18x18x4xf32, #tpu.memory_space<vmem>>, vector<2x16x16x4xf32>
    %54 = vector.shape_cast %53 : vector<2x16x16x4xf32> to vector<512x4xf32>
    %c8 = arith.constant 8 : index
    %c0_73 = arith.constant 0 : index
    %c0_74 = arith.constant 0 : index
    %55 = vector.load %arg1[%c8, %c0_73, %c0_74] : memref<9x4x4xf32, #tpu.memory_space<vmem>>, vector<1x4x4xf32>
    %56 = vector.shape_cast %55 : vector<1x4x4xf32> to vector<4x4xf32>
    %cst_75 = arith.constant dense<0.000000e+00> : vector<512x4xf32>
    %57 = tpu.matmul %54, %56, %cst_75 {dimension_numbers = #tpu.dot_dimension_numbers<[1], [0], [0], [1], [0, 0, 1, 1], [], []>} : vector<512x4xf32>, vector<4x4xf32>, vector<512x4xf32> -> vector<512x4xf32>
    %58 = arith.addf %52, %57 : vector<512x4xf32>
    %c0_76 = arith.constant 0 : index
    %c0_77 = arith.constant 0 : index
    %59 = vector.load %arg2[%c0_76, %c0_77] : memref<1x4xf32, #tpu.memory_space<vmem>>, vector<1x4xf32>
    %c0_78 = arith.constant 0 : index
    %c0_79 = arith.constant 0 : index
    %60 = vector.load %arg3[%c0_78, %c0_79] : memref<1x4xf32, #tpu.memory_space<vmem>>, vector<1x4xf32>
    %cst_80 = arith.constant dense<0.000000e+00> : vector<4xf32>
    %61 = vector.multi_reduction <add>, %58, %cst_80 [0] : vector<512x4xf32> to vector<4xf32>
    %62 = vector.shape_cast %61 : vector<4xf32> to vector<1x4xf32>
    %63 = arith.mulf %58, %58 : vector<512x4xf32>
    %cst_81 = arith.constant dense<0.000000e+00> : vector<4xf32>
    %64 = vector.multi_reduction <add>, %63, %cst_81 [0] : vector<512x4xf32> to vector<4xf32>
    %65 = vector.shape_cast %64 : vector<4xf32> to vector<1x4xf32>
    %cst_82 = arith.constant 0.001953125 : f32
    %66 = vector.broadcast %cst_82 : f32 to vector<1x4xf32>
    %67 = arith.mulf %62, %66 : vector<1x4xf32>
    %cst_83 = arith.constant 0.001953125 : f32
    %68 = vector.broadcast %cst_83 : f32 to vector<1x4xf32>
    %69 = arith.mulf %65, %68 : vector<1x4xf32>
    %70 = arith.mulf %67, %67 : vector<1x4xf32>
    %71 = arith.subf %69, %70 : vector<1x4xf32>
    %cst_84 = arith.constant 9.99999974E-6 : f32
    %72 = vector.broadcast %cst_84 : f32 to vector<1x4xf32>
    %73 = arith.addf %71, %72 : vector<1x4xf32>
    %74 = math.rsqrt %73 : vector<1x4xf32>
    %75 = arith.mulf %59, %74 : vector<1x4xf32>
    %76 = arith.mulf %67, %75 : vector<1x4xf32>
    %77 = arith.subf %60, %76 : vector<1x4xf32>
    %78 = vector.broadcast %75 : vector<1x4xf32> to vector<512x4xf32>
    %79 = arith.mulf %58, %78 : vector<512x4xf32>
    %80 = vector.broadcast %77 : vector<1x4xf32> to vector<512x4xf32>
    %81 = arith.addf %79, %80 : vector<512x4xf32>
    %cst_85 = arith.constant 0.000000e+00 : f32
    %82 = vector.broadcast %cst_85 : f32 to vector<512x4xf32>
    %83 = arith.maximumf %81, %82 : vector<512x4xf32>
    %84 = vector.shape_cast %83 : vector<512x4xf32> to vector<2x16x16x4xf32>
    %c0_86 = arith.constant 0 : index
    %c1_87 = arith.constant 1 : index
    %c1_88 = arith.constant 1 : index
    %c0_89 = arith.constant 0 : index
    %85 = vector.load %arg8[%c0_86, %c1_87, %c1_88, %c0_89] : memref<2x18x18x4xf32, #tpu.memory_space<vmem>>, vector<2x16x16x4xf32>
    tpu.vector_store %arg8[%c0_86, %c1_87, %c1_88, %c0_89], %84 {strides = array<i32>} : memref<2x18x18x4xf32, #tpu.memory_space<vmem>>, vector<2x16x16x4xf32>,
    %cst_90 = arith.constant 0.000000e+00 : f32
    %86 = vector.broadcast %cst_90 : f32 to vector<512x4xf32>
    %c0_91 = arith.constant 0 : index
    %c0_92 = arith.constant 0 : index
    %c0_93 = arith.constant 0 : index
    %c0_94 = arith.constant 0 : index
    %87 = vector.load %arg8[%c0_91, %c0_92, %c0_93, %c0_94] : memref<2x18x18x4xf32, #tpu.memory_space<vmem>>, vector<2x16x16x4xf32>
    %88 = vector.shape_cast %87 : vector<2x16x16x4xf32> to vector<512x4xf32>
    %c0_95 = arith.constant 0 : index
    %c0_96 = arith.constant 0 : index
    %c0_97 = arith.constant 0 : index
    %89 = vector.load %arg4[%c0_95, %c0_96, %c0_97] : memref<9x4x4xf32, #tpu.memory_space<vmem>>, vector<1x4x4xf32>
    %90 = vector.shape_cast %89 : vector<1x4x4xf32> to vector<4x4xf32>
    %cst_98 = arith.constant dense<0.000000e+00> : vector<512x4xf32>
    %91 = tpu.matmul %88, %90, %cst_98 {dimension_numbers = #tpu.dot_dimension_numbers<[1], [0], [0], [1], [0, 0, 1, 1], [], []>} : vector<512x4xf32>, vector<4x4xf32>, vector<512x4xf32> -> vector<512x4xf32>
    %92 = arith.addf %86, %91 : vector<512x4xf32>
    %c0_99 = arith.constant 0 : index
    %c0_100 = arith.constant 0 : index
    %c1_101 = arith.constant 1 : index
    %c0_102 = arith.constant 0 : index
    %93 = vector.load %arg8[%c0_99, %c0_100, %c1_101, %c0_102] : memref<2x18x18x4xf32, #tpu.memory_space<vmem>>, vector<2x16x16x4xf32>
    %94 = vector.shape_cast %93 : vector<2x16x16x4xf32> to vector<512x4xf32>
    %c1_103 = arith.constant 1 : index
    %c0_104 = arith.constant 0 : index
    %c0_105 = arith.constant 0 : index
    %95 = vector.load %arg4[%c1_103, %c0_104, %c0_105] : memref<9x4x4xf32, #tpu.memory_space<vmem>>, vector<1x4x4xf32>
    %96 = vector.shape_cast %95 : vector<1x4x4xf32> to vector<4x4xf32>
    %cst_106 = arith.constant dense<0.000000e+00> : vector<512x4xf32>
    %97 = tpu.matmul %94, %96, %cst_106 {dimension_numbers = #tpu.dot_dimension_numbers<[1], [0], [0], [1], [0, 0, 1, 1], [], []>} : vector<512x4xf32>, vector<4x4xf32>, vector<512x4xf32> -> vector<512x4xf32>
    %98 = arith.addf %92, %97 : vector<512x4xf32>
    %c0_107 = arith.constant 0 : index
    %c0_108 = arith.constant 0 : index
    %c2_109 = arith.constant 2 : index
    %c0_110 = arith.constant 0 : index
    %99 = vector.load %arg8[%c0_107, %c0_108, %c2_109, %c0_110] : memref<2x18x18x4xf32, #tpu.memory_space<vmem>>, vector<2x16x16x4xf32>
    %100 = vector.shape_cast %99 : vector<2x16x16x4xf32> to vector<512x4xf32>
    %c2_111 = arith.constant 2 : index
    %c0_112 = arith.constant 0 : index
    %c0_113 = arith.constant 0 : index
    %101 = vector.load %arg4[%c2_111, %c0_112, %c0_113] : memref<9x4x4xf32, #tpu.memory_space<vmem>>, vector<1x4x4xf32>
    %102 = vector.shape_cast %101 : vector<1x4x4xf32> to vector<4x4xf32>
    %cst_114 = arith.constant dense<0.000000e+00> : vector<512x4xf32>
    %103 = tpu.matmul %100, %102, %cst_114 {dimension_numbers = #tpu.dot_dimension_numbers<[1], [0], [0], [1], [0, 0, 1, 1], [], []>} : vector<512x4xf32>, vector<4x4xf32>, vector<512x4xf32> -> vector<512x4xf32>
    %104 = arith.addf %98, %103 : vector<512x4xf32>
    %c0_115 = arith.constant 0 : index
    %c1_116 = arith.constant 1 : index
    %c0_117 = arith.constant 0 : index
    %c0_118 = arith.constant 0 : index
    %105 = vector.load %arg8[%c0_115, %c1_116, %c0_117, %c0_118] : memref<2x18x18x4xf32, #tpu.memory_space<vmem>>, vector<2x16x16x4xf32>
    %106 = vector.shape_cast %105 : vector<2x16x16x4xf32> to vector<512x4xf32>
    %c3_119 = arith.constant 3 : index
    %c0_120 = arith.constant 0 : index
    %c0_121 = arith.constant 0 : index
    %107 = vector.load %arg4[%c3_119, %c0_120, %c0_121] : memref<9x4x4xf32, #tpu.memory_space<vmem>>, vector<1x4x4xf32>
    %108 = vector.shape_cast %107 : vector<1x4x4xf32> to vector<4x4xf32>
    %cst_122 = arith.constant dense<0.000000e+00> : vector<512x4xf32>
    %109 = tpu.matmul %106, %108, %cst_122 {dimension_numbers = #tpu.dot_dimension_numbers<[1], [0], [0], [1], [0, 0, 1, 1], [], []>} : vector<512x4xf32>, vector<4x4xf32>, vector<512x4xf32> -> vector<512x4xf32>
    %110 = arith.addf %104, %109 : vector<512x4xf32>
    %c0_123 = arith.constant 0 : index
    %c1_124 = arith.constant 1 : index
    %c1_125 = arith.constant 1 : index
    %c0_126 = arith.constant 0 : index
    %111 = vector.load %arg8[%c0_123, %c1_124, %c1_125, %c0_126] : memref<2x18x18x4xf32, #tpu.memory_space<vmem>>, vector<2x16x16x4xf32>
    %112 = vector.shape_cast %111 : vector<2x16x16x4xf32> to vector<512x4xf32>
    %c4_127 = arith.constant 4 : index
    %c0_128 = arith.constant 0 : index
    %c0_129 = arith.constant 0 : index
    %113 = vector.load %arg4[%c4_127, %c0_128, %c0_129] : memref<9x4x4xf32, #tpu.memory_space<vmem>>, vector<1x4x4xf32>
    %114 = vector.shape_cast %113 : vector<1x4x4xf32> to vector<4x4xf32>
    %cst_130 = arith.constant dense<0.000000e+00> : vector<512x4xf32>
    %115 = tpu.matmul %112, %114, %cst_130 {dimension_numbers = #tpu.dot_dimension_numbers<[1], [0], [0], [1], [0, 0, 1, 1], [], []>} : vector<512x4xf32>, vector<4x4xf32>, vector<512x4xf32> -> vector<512x4xf32>
    %116 = arith.addf %110, %115 : vector<512x4xf32>
    %c0_131 = arith.constant 0 : index
    %c1_132 = arith.constant 1 : index
    %c2_133 = arith.constant 2 : index
    %c0_134 = arith.constant 0 : index
    %117 = vector.load %arg8[%c0_131, %c1_132, %c2_133, %c0_134] : memref<2x18x18x4xf32, #tpu.memory_space<vmem>>, vector<2x16x16x4xf32>
    %118 = vector.shape_cast %117 : vector<2x16x16x4xf32> to vector<512x4xf32>
    %c5_135 = arith.constant 5 : index
    %c0_136 = arith.constant 0 : index
    %c0_137 = arith.constant 0 : index
    %119 = vector.load %arg4[%c5_135, %c0_136, %c0_137] : memref<9x4x4xf32, #tpu.memory_space<vmem>>, vector<1x4x4xf32>
    %120 = vector.shape_cast %119 : vector<1x4x4xf32> to vector<4x4xf32>
    %cst_138 = arith.constant dense<0.000000e+00> : vector<512x4xf32>
    %121 = tpu.matmul %118, %120, %cst_138 {dimension_numbers = #tpu.dot_dimension_numbers<[1], [0], [0], [1], [0, 0, 1, 1], [], []>} : vector<512x4xf32>, vector<4x4xf32>, vector<512x4xf32> -> vector<512x4xf32>
    %122 = arith.addf %116, %121 : vector<512x4xf32>
    %c0_139 = arith.constant 0 : index
    %c2_140 = arith.constant 2 : index
    %c0_141 = arith.constant 0 : index
    %c0_142 = arith.constant 0 : index
    %123 = vector.load %arg8[%c0_139, %c2_140, %c0_141, %c0_142] : memref<2x18x18x4xf32, #tpu.memory_space<vmem>>, vector<2x16x16x4xf32>
    %124 = vector.shape_cast %123 : vector<2x16x16x4xf32> to vector<512x4xf32>
    %c6_143 = arith.constant 6 : index
    %c0_144 = arith.constant 0 : index
    %c0_145 = arith.constant 0 : index
    %125 = vector.load %arg4[%c6_143, %c0_144, %c0_145] : memref<9x4x4xf32, #tpu.memory_space<vmem>>, vector<1x4x4xf32>
    %126 = vector.shape_cast %125 : vector<1x4x4xf32> to vector<4x4xf32>
    %cst_146 = arith.constant dense<0.000000e+00> : vector<512x4xf32>
    %127 = tpu.matmul %124, %126, %cst_146 {dimension_numbers = #tpu.dot_dimension_numbers<[1], [0], [0], [1], [0, 0, 1, 1], [], []>} : vector<512x4xf32>, vector<4x4xf32>, vector<512x4xf32> -> vector<512x4xf32>
    %128 = arith.addf %122, %127 : vector<512x4xf32>
    %c0_147 = arith.constant 0 : index
    %c2_148 = arith.constant 2 : index
    %c1_149 = arith.constant 1 : index
    %c0_150 = arith.constant 0 : index
    %129 = vector.load %arg8[%c0_147, %c2_148, %c1_149, %c0_150] : memref<2x18x18x4xf32, #tpu.memory_space<vmem>>, vector<2x16x16x4xf32>
    %130 = vector.shape_cast %129 : vector<2x16x16x4xf32> to vector<512x4xf32>
    %c7_151 = arith.constant 7 : index
    %c0_152 = arith.constant 0 : index
    %c0_153 = arith.constant 0 : index
    %131 = vector.load %arg4[%c7_151, %c0_152, %c0_153] : memref<9x4x4xf32, #tpu.memory_space<vmem>>, vector<1x4x4xf32>
    %132 = vector.shape_cast %131 : vector<1x4x4xf32> to vector<4x4xf32>
    %cst_154 = arith.constant dense<0.000000e+00> : vector<512x4xf32>
    %133 = tpu.matmul %130, %132, %cst_154 {dimension_numbers = #tpu.dot_dimension_numbers<[1], [0], [0], [1], [0, 0, 1, 1], [], []>} : vector<512x4xf32>, vector<4x4xf32>, vector<512x4xf32> -> vector<512x4xf32>
    %134 = arith.addf %128, %133 : vector<512x4xf32>
    %c0_155 = arith.constant 0 : index
    %c2_156 = arith.constant 2 : index
    %c2_157 = arith.constant 2 : index
    %c0_158 = arith.constant 0 : index
    %135 = vector.load %arg8[%c0_155, %c2_156, %c2_157, %c0_158] : memref<2x18x18x4xf32, #tpu.memory_space<vmem>>, vector<2x16x16x4xf32>
    %136 = vector.shape_cast %135 : vector<2x16x16x4xf32> to vector<512x4xf32>
    %c8_159 = arith.constant 8 : index
    %c0_160 = arith.constant 0 : index
    %c0_161 = arith.constant 0 : index
    %137 = vector.load %arg4[%c8_159, %c0_160, %c0_161] : memref<9x4x4xf32, #tpu.memory_space<vmem>>, vector<1x4x4xf32>
    %138 = vector.shape_cast %137 : vector<1x4x4xf32> to vector<4x4xf32>
    %cst_162 = arith.constant dense<0.000000e+00> : vector<512x4xf32>
    %139 = tpu.matmul %136, %138, %cst_162 {dimension_numbers = #tpu.dot_dimension_numbers<[1], [0], [0], [1], [0, 0, 1, 1], [], []>} : vector<512x4xf32>, vector<4x4xf32>, vector<512x4xf32> -> vector<512x4xf32>
    %140 = arith.addf %134, %139 : vector<512x4xf32>
    %c0_163 = arith.constant 0 : index
    %c0_164 = arith.constant 0 : index
    %141 = vector.load %arg5[%c0_163, %c0_164] : memref<1x4xf32, #tpu.memory_space<vmem>>, vector<1x4xf32>
    %c0_165 = arith.constant 0 : index
    %c0_166 = arith.constant 0 : index
    %142 = vector.load %arg6[%c0_165, %c0_166] : memref<1x4xf32, #tpu.memory_space<vmem>>, vector<1x4xf32>
    %cst_167 = arith.constant dense<0.000000e+00> : vector<4xf32>
    %143 = vector.multi_reduction <add>, %140, %cst_167 [0] : vector<512x4xf32> to vector<4xf32>
    %144 = vector.shape_cast %143 : vector<4xf32> to vector<1x4xf32>
    %145 = arith.mulf %140, %140 : vector<512x4xf32>
    %cst_168 = arith.constant dense<0.000000e+00> : vector<4xf32>
    %146 = vector.multi_reduction <add>, %145, %cst_168 [0] : vector<512x4xf32> to vector<4xf32>
    %147 = vector.shape_cast %146 : vector<4xf32> to vector<1x4xf32>
    %cst_169 = arith.constant 0.001953125 : f32
    %148 = vector.broadcast %cst_169 : f32 to vector<1x4xf32>
    %149 = arith.mulf %144, %148 : vector<1x4xf32>
    %cst_170 = arith.constant 0.001953125 : f32
    %150 = vector.broadcast %cst_170 : f32 to vector<1x4xf32>
    %151 = arith.mulf %147, %150 : vector<1x4xf32>
    %152 = arith.mulf %149, %149 : vector<1x4xf32>
    %153 = arith.subf %151, %152 : vector<1x4xf32>
    %cst_171 = arith.constant 9.99999974E-6 : f32
    %154 = vector.broadcast %cst_171 : f32 to vector<1x4xf32>
    %155 = arith.addf %153, %154 : vector<1x4xf32>
    %156 = math.rsqrt %155 : vector<1x4xf32>
    %157 = arith.mulf %141, %156 : vector<1x4xf32>
    %158 = arith.mulf %149, %157 : vector<1x4xf32>
    %159 = arith.subf %142, %158 : vector<1x4xf32>
    %c0_172 = arith.constant 0 : index
    %c0_173 = arith.constant 0 : index
    %c0_174 = arith.constant 0 : index
    %c0_175 = arith.constant 0 : index
    %160 = vector.load %arg0[%c0_172, %c0_173, %c0_174, %c0_175] : memref<2x16x16x4xf32, #tpu.memory_space<vmem>>, vector<2x16x16x4xf32>
    %161 = vector.shape_cast %160 : vector<2x16x16x4xf32> to vector<512x4xf32>
    %162 = vector.broadcast %157 : vector<1x4xf32> to vector<512x4xf32>
    %163 = arith.mulf %140, %162 : vector<512x4xf32>
    %164 = vector.broadcast %159 : vector<1x4xf32> to vector<512x4xf32>
    %165 = arith.addf %163, %164 : vector<512x4xf32>
    %166 = arith.addf %165, %161 : vector<512x4xf32>
    %cst_176 = arith.constant 0.000000e+00 : f32
    %167 = vector.broadcast %cst_176 : f32 to vector<512x4xf32>
    %168 = arith.maximumf %166, %167 : vector<512x4xf32>
    %c0_177 = arith.constant 0 : index
    %c0_178 = arith.constant 0 : index
    %169 = vector.load %arg7[%c0_177, %c0_178] : memref<512x4xf32, #tpu.memory_space<vmem>>, vector<512x4xf32>
    tpu.vector_store %arg7[%c0_177, %c0_178], %168 {strides = array<i32>} : memref<512x4xf32, #tpu.memory_space<vmem>>, vector<512x4xf32>,
    return
  }
}

</mosaic_0001>

<llo_original>
// kernel: tpu_custom_call.1
$region0: #{tpu_custom_call.1}
  #allocation0 [shape = 'u32[]', space=smem, size = 0x4, offset = 0x4, fixed_abs, tag = 'smem constant byte address 0x4 - core index']
  #allocation1 [shape = 'u32[144,128]{1,0:T(1,128)}', space=vmem, size = 0x12000, scoped, tag = 'internal scratch']
  #allocation2 [shape = 'f32[2,18,18,4]{3,2,1,0:T(8,128)}', space=vmem, size = 0x6c000, scoped, tag = 'scratch operand']
  %s0 = inlined_call_operand.vmem [shape: f32[2,16,16,4], index: 0, kind: input, shape index: {}]
  %s1 = inlined_call_operand.vmem [shape: f32[9,4,4], index: 1, kind: input, shape index: {}]
  %s2 = inlined_call_operand.vmem [shape: f32[1,4], index: 2, kind: input, shape index: {}]
  %s3 = inlined_call_operand.vmem [shape: f32[1,4], index: 3, kind: input, shape index: {}]
  %s4 = inlined_call_operand.vmem [shape: f32[9,4,4], index: 4, kind: input, shape index: {}]
  %s5 = inlined_call_operand.vmem [shape: f32[1,4], index: 5, kind: input, shape index: {}]
  %s6 = inlined_call_operand.vmem [shape: f32[1,4], index: 6, kind: input, shape index: {}]
  %s7 = inlined_call_operand.vmem [shape: f32[512,4], index: 7, kind: output, shape index: {}]
  %s8 = sld [smem:[#allocation0]]
  $region38: #{tpu_custom_call.1} parent=0
    _
  %s10 = ssub.s32 1, %s8
  %s11 = scalar_select 0, %s10, %s8
  // Predicated region
  $region2: #{tpu_custom_call.1} parent=0 // pred_check
    _
  $region3: #{tpu_custom_call.1} parent=0 // pred_check_branch
    %13 = sbr.rel (0) target = $region5
  $region4: #{tpu_custom_call.1} parent=0 // pred_region
    _
  $region5: #{tpu_custom_call.1} parent=0 // pred_fallthru
    _
  // Predicated region
  $region6: #{tpu_custom_call.1} parent=0 // pred_check
    _
  $region7: #{tpu_custom_call.1} parent=0 // pred_check_branch
    %15 = sbr.rel (0) target = $region9
  $region8: #{tpu_custom_call.1} parent=0 // pred_region
    _
  $region9: #{tpu_custom_call.1} parent=0 // pred_fallthru
    _
  // Predicated region
  $region10: #{tpu_custom_call.1} parent=0 // pred_check
    _
  $region11: #{tpu_custom_call.1} parent=0 // pred_check_branch
    %17 = sbr.rel (0) target = $region13
  $region12: #{tpu_custom_call.1} parent=0 // pred_region
    _
  $region13: #{tpu_custom_call.1} parent=0 // pred_fallthru
    _
  // Predicated region
  $region14: #{tpu_custom_call.1} parent=0 // pred_check
    _
  $region15: #{tpu_custom_call.1} parent=0 // pred_check_branch
    %19 = sbr.rel (0) target = $region17
  $region16: #{tpu_custom_call.1} parent=0 // pred_region
    _
  $region17: #{tpu_custom_call.1} parent=0 // pred_fallthru
    _
  // Predicated region
  $region18: #{tpu_custom_call.1} parent=0 // pred_check
    _
  $region19: #{tpu_custom_call.1} parent=0 // pred_check_branch
    %21 = sbr.rel (0) target = $region21
  $region20: #{tpu_custom_call.1} parent=0 // pred_region
    _
  $region21: #{tpu_custom_call.1} parent=0 // pred_fallthru
    _
  // Predicated region
  $region22: #{tpu_custom_call.1} parent=0 // pred_check
    _
  $region23: #{tpu_custom_call.1} parent=0 // pred_check_branch
    %23 = sbr.rel (0) target = $region25
  $region24: #{tpu_custom_call.1} parent=0 // pred_region
    _
  $region25: #{tpu_custom_call.1} parent=0 // pred_fallthru
    _
  // Predicated region
  $region26: #{tpu_custom_call.1} parent=0 // pred_check
    _
  $region27: #{tpu_custom_call.1} parent=0 // pred_check_branch
    %25 = sbr.rel (0) target = $region29
  $region28: #{tpu_custom_call.1} parent=0 // pred_region
    _
  $region29: #{tpu_custom_call.1} parent=0 // pred_fallthru
    _
  %vm26 = vcmask 31744
  %27 = vst.msk [vmem:[#allocation2] sm:$0xff] %vm26, 0.0
  %28 = vst.msk [vmem:[#allocation2 + $0x8] sm:$0xff] %vm26, 0.0
  %vm29 = vcmask 25600
  %30 = vst.msk [vmem:[#allocation2 + $0x10] sm:$0x3] %vm29, 0.0
  %31 = vst.msk [vmem:[#allocation2 + $0x18] sm:$0xff] %vm26, 0.0
  %32 = vst.msk [vmem:[#allocation2 + $0x20] sm:$0xff] %vm26, 0.0
  %33 = vst.msk [vmem:[#allocation2 + $0x28] sm:$0x3] %vm29, 0.0
  %34 = vst.msk [vmem:[#allocation2 + $0x30] sm:$0xff] %vm26, 0.0
  %35 = vst.msk [vmem:[#allocation2 + $0x38] sm:$0xff] %vm26, 0.0
  %36 = vst.msk [vmem:[#allocation2 + $0x40] sm:$0x3] %vm29, 0.0
  %37 = vst.msk [vmem:[#allocation2 + $0x48] sm:$0xff] %vm26, 0.0
  %38 = vst.msk [vmem:[#allocation2 + $0x50] sm:$0xff] %vm26, 0.0
  %39 = vst.msk [vmem:[#allocation2 + $0x58] sm:$0x3] %vm29, 0.0
  %40 = vst.msk [vmem:[#allocation2 + $0x60] sm:$0xff] %vm26, 0.0
  %41 = vst.msk [vmem:[#allocation2 + $0x68] sm:$0xff] %vm26, 0.0
  %42 = vst.msk [vmem:[#allocation2 + $0x70] sm:$0x3] %vm29, 0.0
  %43 = vst.msk [vmem:[#allocation2 + $0x78] sm:$0xff] %vm26, 0.0
  %44 = vst.msk [vmem:[#allocation2 + $0x80] sm:$0xff] %vm26, 0.0
  %45 = vst.msk [vmem:[#allocation2 + $0x88] sm:$0x3] %vm29, 0.0
  %46 = vst.msk [vmem:[#allocation2 + $0x90] sm:$0xff] %vm26, 0.0
  %47 = vst.msk [vmem:[#allocation2 + $0x98] sm:$0xff] %vm26, 0.0
  %48 = vst.msk [vmem:[#allocation2 + $0xa0] sm:$0x3] %vm29, 0.0
  %49 = vst.msk [vmem:[#allocation2 + $0xa8] sm:$0xff] %vm26, 0.0
  %50 = vst.msk [vmem:[#allocation2 + $0xb0] sm:$0xff] %vm26, 0.0
  %51 = vst.msk [vmem:[#allocation2 + $0xb8] sm:$0x3] %vm29, 0.0
  %52 = vst.msk [vmem:[#allocation2 + $0xc0] sm:$0xff] %vm26, 0.0
  %53 = vst.msk [vmem:[#allocation2 + $0xc8] sm:$0xff] %vm26, 0.0
  %54 = vst.msk [vmem:[#allocation2 + $0xd0] sm:$0x3] %vm29, 0.0
  %55 = vst.msk [vmem:[#allocation2 + $0xd8] sm:$0xff] %vm26, 0.0
  %56 = vst.msk [vmem:[#allocation2 + $0xe0] sm:$0xff] %vm26, 0.0
  %57 = vst.msk [vmem:[#allocation2 + $0xe8] sm:$0x3] %vm29, 0.0
  %58 = vst.msk [vmem:[#allocation2 + $0xf0] sm:$0xff] %vm26, 0.0
  %59 = vst.msk [vmem:[#allocation2 + $0xf8] sm:$0xff] %vm26, 0.0
  %60 = vst.msk [vmem:[#allocation2 + $0x100] sm:$0x3] %vm29, 0.0
  %61 = vst.msk [vmem:[#allocation2 + $0x108] sm:$0xff] %vm26, 0.0
  %62 = vst.msk [vmem:[#allocation2 + $0x110] sm:$0xff] %vm26, 0.0
  %63 = vst.msk [vmem:[#allocation2 + $0x118] sm:$0x3] %vm29, 0.0
  %64 = vst.msk [vmem:[#allocation2 + $0x120] sm:$0xff] %vm26, 0.0
  %65 = vst.msk [vmem:[#allocation2 + $0x128] sm:$0xff] %vm26, 0.0
  %66 = vst.msk [vmem:[#allocation2 + $0x130] sm:$0x3] %vm29, 0.0
  %67 = vst.msk [vmem:[#allocation2 + $0x138] sm:$0xff] %vm26, 0.0
  %68 = vst.msk [vmem:[#allocation2 + $0x140] sm:$0xff] %vm26, 0.0
  %69 = vst.msk [vmem:[#allocation2 + $0x148] sm:$0x3] %vm29, 0.0
  %70 = vst.msk [vmem:[#allocation2 + $0x150] sm:$0xff] %vm26, 0.0
  %71 = vst.msk [vmem:[#allocation2 + $0x158] sm:$0xff] %vm26, 0.0
  %72 = vst.msk [vmem:[#allocation2 + $0x160] sm:$0x3] %vm29, 0.0
  %73 = vst.msk [vmem:[#allocation2 + $0x168] sm:$0xff] %vm26, 0.0
  %74 = vst.msk [vmem:[#allocation2 + $0x170] sm:$0xff] %vm26, 0.0
  %75 = vst.msk [vmem:[#allocation2 + $0x178] sm:$0x3] %vm29, 0.0
  %76 = vst.msk [vmem:[#allocation2 + $0x180] sm:$0xff] %vm26, 0.0
  %77 = vst.msk [vmem:[#allocation2 + $0x188] sm:$0xff] %vm26, 0.0
  %78 = vst.msk [vmem:[#allocation2 + $0x190] sm:$0x3] %vm29, 0.0
  %79 = vst.msk [vmem:[#allocation2 + $0x198] sm:$0xff] %vm26, 0.0
  %80 = vst.msk [vmem:[#allocation2 + $0x1a0] sm:$0xff] %vm26, 0.0
  %81 = vst.msk [vmem:[#allocation2 + $0x1a8] sm:$0x3] %vm29, 0.0
  %82 = vst.msk [vmem:[#allocation2 + $0x1b0] sm:$0xff] %vm26, 0.0
  %83 = vst.msk [vmem:[#allocation2 + $0x1b8] sm:$0xff] %vm26, 0.0
  %84 = vst.msk [vmem:[#allocation2 + $0x1c0] sm:$0x3] %vm29, 0.0
  %85 = vst.msk [vmem:[#allocation2 + $0x1c8] sm:$0xff] %vm26, 0.0
  %86 = vst.msk [vmem:[#allocation2 + $0x1d0] sm:$0xff] %vm26, 0.0
  %87 = vst.msk [vmem:[#allocation2 + $0x1d8] sm:$0x3] %vm29, 0.0
  %88 = vst.msk [vmem:[#allocation2 + $0x1e0] sm:$0xff] %vm26, 0.0
  %89 = vst.msk [vmem:[#allocation2 + $0x1e8] sm:$0xff] %vm26, 0.0
  %90 = vst.msk [vmem:[#allocation2 + $0x1f0] sm:$0x3] %vm29, 0.0
  %91 = vst.msk [vmem:[#allocation2 + $0x1f8] sm:$0xff] %vm26, 0.0
  %92 = vst.msk [vmem:[#allocation2 + $0x200] sm:$0xff] %vm26, 0.0
  %93 = vst.msk [vmem:[#allocation2 + $0x208] sm:$0x3] %vm29, 0.0
  %94 = vst.msk [vmem:[#allocation2 + $0x210] sm:$0xff] %vm26, 0.0
  %95 = vst.msk [vmem:[#allocation2 + $0x218] sm:$0xff] %vm26, 0.0
  %96 = vst.msk [vmem:[#allocation2 + $0x220] sm:$0x3] %vm29, 0.0
  %97 = vst.msk [vmem:[#allocation2 + $0x228] sm:$0xff] %vm26, 0.0
  %98 = vst.msk [vmem:[#allocation2 + $0x230] sm:$0xff] %vm26, 0.0
  %99 = vst.msk [vmem:[#allocation2 + $0x238] sm:$0x3] %vm29, 0.0
  %100 = vst.msk [vmem:[#allocation2 + $0x240] sm:$0xff] %vm26, 0.0
  %101 = vst.msk [vmem:[#allocation2 + $0x248] sm:$0xff] %vm26, 0.0
  %102 = vst.msk [vmem:[#allocation2 + $0x250] sm:$0x3] %vm29, 0.0
  %103 = vst.msk [vmem:[#allocation2 + $0x258] sm:$0xff] %vm26, 0.0
  %104 = vst.msk [vmem:[#allocation2 + $0x260] sm:$0xff] %vm26, 0.0
  %105 = vst.msk [vmem:[#allocation2 + $0x268] sm:$0x3] %vm29, 0.0
  %106 = vst.msk [vmem:[#allocation2 + $0x270] sm:$0xff] %vm26, 0.0
  %107 = vst.msk [vmem:[#allocation2 + $0x278] sm:$0xff] %vm26, 0.0
  %108 = vst.msk [vmem:[#allocation2 + $0x280] sm:$0x3] %vm29, 0.0
  %109 = vst.msk [vmem:[#allocation2 + $0x288] sm:$0xff] %vm26, 0.0
  %110 = vst.msk [vmem:[#allocation2 + $0x290] sm:$0xff] %vm26, 0.0
  %111 = vst.msk [vmem:[#allocation2 + $0x298] sm:$0x3] %vm29, 0.0
  %112 = vst.msk [vmem:[#allocation2 + $0x2a0] sm:$0xff] %vm26, 0.0
  %113 = vst.msk [vmem:[#allocation2 + $0x2a8] sm:$0xff] %vm26, 0.0
  %114 = vst.msk [vmem:[#allocation2 + $0x2b0] sm:$0x3] %vm29, 0.0
  %115 = vst.msk [vmem:[#allocation2 + $0x2b8] sm:$0xff] %vm26, 0.0
  %116 = vst.msk [vmem:[#allocation2 + $0x2c0] sm:$0xff] %vm26, 0.0
  %117 = vst.msk [vmem:[#allocation2 + $0x2c8] sm:$0x3] %vm29, 0.0
  %118 = vst.msk [vmem:[#allocation2 + $0x2d0] sm:$0xff] %vm26, 0.0
  %119 = vst.msk [vmem:[#allocation2 + $0x2d8] sm:$0xff] %vm26, 0.0
  %120 = vst.msk [vmem:[#allocation2 + $0x2e0] sm:$0x3] %vm29, 0.0
  %121 = vst.msk [vmem:[#allocation2 + $0x2e8] sm:$0xff] %vm26, 0.0
  %122 = vst.msk [vmem:[#allocation2 + $0x2f0] sm:$0xff] %vm26, 0.0
  %123 = vst.msk [vmem:[#allocation2 + $0x2f8] sm:$0x3] %vm29, 0.0
  %124 = vst.msk [vmem:[#allocation2 + $0x300] sm:$0xff] %vm26, 0.0
  %125 = vst.msk [vmem:[#allocation2 + $0x308] sm:$0xff] %vm26, 0.0
  %126 = vst.msk [vmem:[#allocation2 + $0x310] sm:$0x3] %vm29, 0.0
  %127 = vst.msk [vmem:[#allocation2 + $0x318] sm:$0xff] %vm26, 0.0
  %128 = vst.msk [vmem:[#allocation2 + $0x320] sm:$0xff] %vm26, 0.0
  %129 = vst.msk [vmem:[#allocation2 + $0x328] sm:$0x3] %vm29, 0.0
  %130 = vst.msk [vmem:[#allocation2 + $0x330] sm:$0xff] %vm26, 0.0
  %131 = vst.msk [vmem:[#allocation2 + $0x338] sm:$0xff] %vm26, 0.0
  %132 = vst.msk [vmem:[#allocation2 + $0x340] sm:$0x3] %vm29, 0.0
  %133 = vst.msk [vmem:[#allocation2 + $0x348] sm:$0xff] %vm26, 0.0
  %134 = vst.msk [vmem:[#allocation2 + $0x350] sm:$0xff] %vm26, 0.0
  %135 = vst.msk [vmem:[#allocation2 + $0x358] sm:$0x3] %vm29, 0.0
  %v136 = vld [vmem:[%s0] sm:$0xff]
  %v137 = vld [vmem:[%s0 + $0x8] sm:$0xff]
  %v138 = vld [vmem:[%s0 + $0x10] sm:$0xff]
  %v139 = vld [vmem:[%s0 + $0x18] sm:$0xff]
  %v140 = vld [vmem:[%s0 + $0x20] sm:$0xff]
  %v141 = vld [vmem:[%s0 + $0x28] sm:$0xff]
  %v142 = vld [vmem:[%s0 + $0x30] sm:$0xff]
  %v143 = vld [vmem:[%s0 + $0x38] sm:$0xff]
  %v144 = vld [vmem:[%s0 + $0x40] sm:$0xff]
  %v145 = vld [vmem:[%s0 + $0x48] sm:$0xff]
  %v146 = vld [vmem:[%s0 + $0x50] sm:$0xff]
  %v147 = vld [vmem:[%s0 + $0x58] sm:$0xff]
  %v148 = vld [vmem:[%s0 + $0x60] sm:$0xff]
  %v149 = vld [vmem:[%s0 + $0x68] sm:$0xff]
  %v150 = vld [vmem:[%s0 + $0x70] sm:$0xff]
  %v151 = vld [vmem:[%s0 + $0x78] sm:$0xff]
  %v152 = vld [vmem:[%s0 + $0x80] sm:$0xff]
  %v153 = vld [vmem:[%s0 + $0x88] sm:$0xff]
  %v154 = vld [vmem:[%s0 + $0x90] sm:$0xff]
  %v155 = vld [vmem:[%s0 + $0x98] sm:$0xff]
  %v156 = vld [vmem:[%s0 + $0xa0] sm:$0xff]
  %v157 = vld [vmem:[%s0 + $0xa8] sm:$0xff]
  %v158 = vld [vmem:[%s0 + $0xb0] sm:$0xff]
  %v159 = vld [vmem:[%s0 + $0xb8] sm:$0xff]
  %v160 = vld [vmem:[%s0 + $0xc0] sm:$0xff]
  %v161 = vld [vmem:[%s0 + $0xc8] sm:$0xff]
  %v162 = vld [vmem:[%s0 + $0xd0] sm:$0xff]
  %v163 = vld [vmem:[%s0 + $0xd8] sm:$0xff]
  %v164 = vld [vmem:[%s0 + $0xe0] sm:$0xff]
  %v165 = vld [vmem:[%s0 + $0xe8] sm:$0xff]
  %v166 = vld [vmem:[%s0 + $0xf0] sm:$0xff]
  %v167 = vld [vmem:[%s0 + $0xf8] sm:$0xff]
  %v168 = vld [vmem:[%s0 + $0x100] sm:$0xff]
  %v169 = vld [vmem:[%s0 + $0x108] sm:$0xff]
  %v170 = vld [vmem:[%s0 + $0x110] sm:$0xff]
  %v171 = vld [vmem:[%s0 + $0x118] sm:$0xff]
  %v172 = vld [vmem:[%s0 + $0x120] sm:$0xff]
  %v173 = vld [vmem:[%s0 + $0x128] sm:$0xff]
  %v174 = vld [vmem:[%s0 + $0x130] sm:$0xff]
  %v175 = vld [vmem:[%s0 + $0x138] sm:$0xff]
  %v176 = vld [vmem:[%s0 + $0x140] sm:$0xff]
  %v177 = vld [vmem:[%s0 + $0x148] sm:$0xff]
  %v178 = vld [vmem:[%s0 + $0x150] sm:$0xff]
  %v179 = vld [vmem:[%s0 + $0x158] sm:$0xff]
  %v180 = vld [vmem:[%s0 + $0x160] sm:$0xff]
  %v181 = vld [vmem:[%s0 + $0x168] sm:$0xff]
  %v182 = vld [vmem:[%s0 + $0x170] sm:$0xff]
  %v183 = vld [vmem:[%s0 + $0x178] sm:$0xff]
  %v184 = vld [vmem:[%s0 + $0x180] sm:$0xff]
  %v185 = vld [vmem:[%s0 + $0x188] sm:$0xff]
  %v186 = vld [vmem:[%s0 + $0x190] sm:$0xff]
  %v187 = vld [vmem:[%s0 + $0x198] sm:$0xff]
  %v188 = vld [vmem:[%s0 + $0x1a0] sm:$0xff]
  %v189 = vld [vmem:[%s0 + $0x1a8] sm:$0xff]
  %v190 = vld [vmem:[%s0 + $0x1b0] sm:$0xff]
  %v191 = vld [vmem:[%s0 + $0x1b8] sm:$0xff]
  %v192 = vld [vmem:[%s0 + $0x1c0] sm:$0xff]
  %v193 = vld [vmem:[%s0 + $0x1c8] sm:$0xff]
  %v194 = vld [vmem:[%s0 + $0x1d0] sm:$0xff]
  %v195 = vld [vmem:[%s0 + $0x1d8] sm:$0xff]
  %v196 = vld [vmem:[%s0 + $0x1e0] sm:$0xff]
  %v197 = vld [vmem:[%s0 + $0x1e8] sm:$0xff]
  %v198 = vld [vmem:[%s0 + $0x1f0] sm:$0xff]
  %v199 = vld [vmem:[%s0 + $0x1f8] sm:$0xff]
  %s200 = scalar_lea.vmem [#allocation2], 24
  %201 = vst.msk [vmem:[%s200 + $0x1] sm:$0xff] %vm26, %v136
  %202 = vst.msk [vmem:[%s200 + $0x9] sm:$0xff] %vm26, %v137
  %203 = vst.msk [vmem:[%s200 + $0x19] sm:$0xff] %vm26, %v138
  %204 = vst.msk [vmem:[%s200 + $0x21] sm:$0xff] %vm26, %v139
  %205 = vst.msk [vmem:[%s200 + $0x31] sm:$0xff] %vm26, %v140
  %206 = vst.msk [vmem:[%s200 + $0x39] sm:$0xff] %vm26, %v141
  %207 = vst.msk [vmem:[%s200 + $0x49] sm:$0xff] %vm26, %v142
  %208 = vst.msk [vmem:[%s200 + $0x51] sm:$0xff] %vm26, %v143
  %209 = vst.msk [vmem:[%s200 + $0x61] sm:$0xff] %vm26, %v144
  %210 = vst.msk [vmem:[%s200 + $0x69] sm:$0xff] %vm26, %v145
  %211 = vst.msk [vmem:[%s200 + $0x79] sm:$0xff] %vm26, %v146
  %212 = vst.msk [vmem:[%s200 + $0x81] sm:$0xff] %vm26, %v147
  %213 = vst.msk [vmem:[%s200 + $0x91] sm:$0xff] %vm26, %v148
  %214 = vst.msk [vmem:[%s200 + $0x99] sm:$0xff] %vm26, %v149
  %215 = vst.msk [vmem:[%s200 + $0xa9] sm:$0xff] %vm26, %v150
  %216 = vst.msk [vmem:[%s200 + $0xb1] sm:$0xff] %vm26, %v151
  %217 = vst.msk [vmem:[%s200 + $0xc1] sm:$0xff] %vm26, %v152
  %218 = vst.msk [vmem:[%s200 + $0xc9] sm:$0xff] %vm26, %v153
  %219 = vst.msk [vmem:[%s200 + $0xd9] sm:$0xff] %vm26, %v154
  %220 = vst.msk [vmem:[%s200 + $0xe1] sm:$0xff] %vm26, %v155
  %221 = vst.msk [vmem:[%s200 + $0xf1] sm:$0xff] %vm26, %v156
  %222 = vst.msk [vmem:[%s200 + $0xf9] sm:$0xff] %vm26, %v157
  %223 = vst.msk [vmem:[%s200 + $0x109] sm:$0xff] %vm26, %v158
  %224 = vst.msk [vmem:[%s200 + $0x111] sm:$0xff] %vm26, %v159
  %225 = vst.msk [vmem:[%s200 + $0x121] sm:$0xff] %vm26, %v160
  %226 = vst.msk [vmem:[%s200 + $0x129] sm:$0xff] %vm26, %v161
  %227 = vst.msk [vmem:[%s200 + $0x139] sm:$0xff] %vm26, %v162
  %228 = vst.msk [vmem:[%s200 + $0x141] sm:$0xff] %vm26, %v163
  %229 = vst.msk [vmem:[%s200 + $0x151] sm:$0xff] %vm26, %v164
  %230 = vst.msk [vmem:[%s200 + $0x159] sm:$0xff] %vm26, %v165
  %231 = vst.msk [vmem:[%s200 + $0x169] sm:$0xff] %vm26, %v166
  %232 = vst.msk [vmem:[%s200 + $0x171] sm:$0xff] %vm26, %v167
  %233 = vst.msk [vmem:[%s200 + $0x1b1] sm:$0xff] %vm26, %v168
  %234 = vst.msk [vmem:[%s200 + $0x1b9] sm:$0xff] %vm26, %v169
  %235 = vst.msk [vmem:[%s200 + $0x1c9] sm:$0xff] %vm26, %v170
  %236 = vst.msk [vmem:[%s200 + $0x1d1] sm:$0xff] %vm26, %v171
  %237 = vst.msk [vmem:[%s200 + $0x1e1] sm:$0xff] %vm26, %v172
  %238 = vst.msk [vmem:[%s200 + $0x1e9] sm:$0xff] %vm26, %v173
  %239 = vst.msk [vmem:[%s200 + $0x1f9] sm:$0xff] %vm26, %v174
  %240 = vst.msk [vmem:[%s200 + $0x201] sm:$0xff] %vm26, %v175
  %241 = vst.msk [vmem:[%s200 + $0x211] sm:$0xff] %vm26, %v176
  %242 = vst.msk [vmem:[%s200 + $0x219] sm:$0xff] %vm26, %v177
  %243 = vst.msk [vmem:[%s200 + $0x229] sm:$0xff] %vm26, %v178
  %244 = vst.msk [vmem:[%s200 + $0x231] sm:$0xff] %vm26, %v179
  %245 = vst.msk [vmem:[%s200 + $0x241] sm:$0xff] %vm26, %v180
  %246 = vst.msk [vmem:[%s200 + $0x249] sm:$0xff] %vm26, %v181
  %247 = vst.msk [vmem:[%s200 + $0x259] sm:$0xff] %vm26, %v182
  %248 = vst.msk [vmem:[%s200 + $0x261] sm:$0xff] %vm26, %v183
  %249 = vst.msk [vmem:[%s200 + $0x271] sm:$0xff] %vm26, %v184
  %250 = vst.msk [vmem:[%s200 + $0x279] sm:$0xff] %vm26, %v185
  %251 = vst.msk [vmem:[%s200 + $0x289] sm:$0xff] %vm26, %v186
  %252 = vst.msk [vmem:[%s200 + $0x291] sm:$0xff] %vm26, %v187
  %253 = vst.msk [vmem:[%s200 + $0x2a1] sm:$0xff] %vm26, %v188
  %254 = vst.msk [vmem:[%s200 + $0x2a9] sm:$0xff] %vm26, %v189
  %255 = vst.msk [vmem:[%s200 + $0x2b9] sm:$0xff] %vm26, %v190
  %256 = vst.msk [vmem:[%s200 + $0x2c1] sm:$0xff] %vm26, %v191
  %257 = vst.msk [vmem:[%s200 + $0x2d1] sm:$0xff] %vm26, %v192
  %258 = vst.msk [vmem:[%s200 + $0x2d9] sm:$0xff] %vm26, %v193
  %259 = vst.msk [vmem:[%s200 + $0x2e9] sm:$0xff] %vm26, %v194
  %260 = vst.msk [vmem:[%s200 + $0x2f1] sm:$0xff] %vm26, %v195
  %261 = vst.msk [vmem:[%s200 + $0x301] sm:$0xff] %vm26, %v196
  %262 = vst.msk [vmem:[%s200 + $0x309] sm:$0xff] %vm26, %v197
  %263 = vst.msk [vmem:[%s200 + $0x319] sm:$0xff] %vm26, %v198
  %264 = vst.msk [vmem:[%s200 + $0x321] sm:$0xff] %vm26, %v199
  %v265 = vld [vmem:[#allocation2] sm:$0xff]
  %v266 = vld [vmem:[#allocation2 + $0x8] sm:$0xff]
  %v267 = vld [vmem:[#allocation2 + $0x18] sm:$0xff]
  %v268 = vld [vmem:[#allocation2 + $0x20] sm:$0xff]
  %v269 = vld [vmem:[#allocation2 + $0x30] sm:$0xff]
  %v270 = vld [vmem:[#allocation2 + $0x38] sm:$0xff]
  %v271 = vld [vmem:[#allocation2 + $0x48] sm:$0xff]
  %v272 = vld [vmem:[#allocation2 + $0x50] sm:$0xff]
  %v273 = vld [vmem:[#allocation2 + $0x60] sm:$0xff]
  %v274 = vld [vmem:[#allocation2 + $0x68] sm:$0xff]
  %v275 = vld [vmem:[#allocation2 + $0x78] sm:$0xff]
  %v276 = vld [vmem:[#allocation2 + $0x80] sm:$0xff]
  %v277 = vld [vmem:[#allocation2 + $0x90] sm:$0xff]
  %v278 = vld [vmem:[#allocation2 + $0x98] sm:$0xff]
  %v279 = vld [vmem:[#allocation2 + $0xa8] sm:$0xff]
  %v280 = vld [vmem:[#allocation2 + $0xb0] sm:$0xff]
  %v281 = vld [vmem:[#allocation2 + $0xc0] sm:$0xff]
  %v282 = vld [vmem:[#allocation2 + $0xc8] sm:$0xff]
  %v283 = vld [vmem:[#allocation2 + $0xd8] sm:$0xff]
  %v284 = vld [vmem:[#allocation2 + $0xe0] sm:$0xff]
  %v285 = vld [vmem:[#allocation2 + $0xf0] sm:$0xff]
  %v286 = vld [vmem:[#allocation2 + $0xf8] sm:$0xff]
  %v287 = vld [vmem:[#allocation2 + $0x108] sm:$0xff]
  %v288 = vld [vmem:[#allocation2 + $0x110] sm:$0xff]
  %v289 = vld [vmem:[#allocation2 + $0x120] sm:$0xff]
  %v290 = vld [vmem:[#allocation2 + $0x128] sm:$0xff]
  %v291 = vld [vmem:[#allocation2 + $0x138] sm:$0xff]
  %v292 = vld [vmem:[#allocation2 + $0x140] sm:$0xff]
  %v293 = vld [vmem:[#allocation2 + $0x150] sm:$0xff]
  %v294 = vld [vmem:[#allocation2 + $0x158] sm:$0xff]
  %v295 = vld [vmem:[#allocation2 + $0x168] sm:$0xff]
  %v296 = vld [vmem:[#allocation2 + $0x170] sm:$0xff]
  %v297 = vld [vmem:[#allocation2 + $0x1b0] sm:$0xff]
  %v298 = vld [vmem:[#allocation2 + $0x1b8] sm:$0xff]
  %v299 = vld [vmem:[#allocation2 + $0x1c8] sm:$0xff]
  %v300 = vld [vmem:[#allocation2 + $0x1d0] sm:$0xff]
  %v301 = vld [vmem:[#allocation2 + $0x1e0] sm:$0xff]
  %v302 = vld [vmem:[#allocation2 + $0x1e8] sm:$0xff]
  %v303 = vld [vmem:[#allocation2 + $0x1f8] sm:$0xff]
  %v304 = vld [vmem:[#allocation2 + $0x200] sm:$0xff]
  %v305 = vld [vmem:[#allocation2 + $0x210] sm:$0xff]
  %v306 = vld [vmem:[#allocation2 + $0x218] sm:$0xff]
  %v307 = vld [vmem:[#allocation2 + $0x228] sm:$0xff]
  %v308 = vld [vmem:[#allocation2 + $0x230] sm:$0xff]
  %v309 = vld [vmem:[#allocation2 + $0x240] sm:$0xff]
  %v310 = vld [vmem:[#allocation2 + $0x248] sm:$0xff]
  %v311 = vld [vmem:[#allocation2 + $0x258] sm:$0xff]
  %v312 = vld [vmem:[#allocation2 + $0x260] sm:$0xff]
  %v313 = vld [vmem:[#allocation2 + $0x270] sm:$0xff]
  %v314 = vld [vmem:[#allocation2 + $0x278] sm:$0xff]
  %v315 = vld [vmem:[#allocation2 + $0x288] sm:$0xff]
  %v316 = vld [vmem:[#allocation2 + $0x290] sm:$0xff]
  %v317 = vld [vmem:[#allocation2 + $0x2a0] sm:$0xff]
  %v318 = vld [vmem:[#allocation2 + $0x2a8] sm:$0xff]
  %v319 = vld [vmem:[#allocation2 + $0x2b8] sm:$0xff]
  %v320 = vld [vmem:[#allocation2 + $0x2c0] sm:$0xff]
  %v321 = vld [vmem:[#allocation2 + $0x2d0] sm:$0xff]
  %v322 = vld [vmem:[#allocation2 + $0x2d8] sm:$0xff]
  %v323 = vld [vmem:[#allocation2 + $0x2e8] sm:$0xff]
  %v324 = vld [vmem:[#allocation2 + $0x2f0] sm:$0xff]
  %v325 = vld [vmem:[#allocation2 + $0x300] sm:$0xff]
  %v326 = vld [vmem:[#allocation2 + $0x308] sm:$0xff]
  %v327 = vld [vmem:[#allocation2 + $0x318] sm:$0xff]
  %v328 = vld [vmem:[#allocation2 + $0x320] sm:$0xff]
  %v329 = vld [vmem:[%s1] sm:$0xf]
  %v330 = vld [vmem:[#allocation2 + $0x1] sm:$0xff]
  %v331 = vld [vmem:[#allocation2 + $0x9] sm:$0xff]
  %v332 = vld [vmem:[#allocation2 + $0x19] sm:$0xff]
  %v333 = vld [vmem:[#allocation2 + $0x21] sm:$0xff]
  %v334 = vld [vmem:[#allocation2 + $0x31] sm:$0xff]
  %v335 = vld [vmem:[#allocation2 + $0x39] sm:$0xff]
  %v336 = vld [vmem:[#allocation2 + $0x49] sm:$0xff]
  %v337 = vld [vmem:[#allocation2 + $0x51] sm:$0xff]
  %v338 = vld [vmem:[#allocation2 + $0x61] sm:$0xff]
  %v339 = vld [vmem:[#allocation2 + $0x69] sm:$0xff]
  %v340 = vld [vmem:[#allocation2 + $0x79] sm:$0xff]
  %v341 = vld [vmem:[#allocation2 + $0x81] sm:$0xff]
  %v342 = vld [vmem:[#allocation2 + $0x91] sm:$0xff]
  %v343 = vld [vmem:[#allocation2 + $0x99] sm:$0xff]
  %v344 = vld [vmem:[#allocation2 + $0xa9] sm:$0xff]
  %v345 = vld [vmem:[#allocation2 + $0xb1] sm:$0xff]
  %v346 = vld [vmem:[#allocation2 + $0xc1] sm:$0xff]
  %v347 = vld [vmem:[#allocation2 + $0xc9] sm:$0xff]
  %v348 = vld [vmem:[#allocation2 + $0xd9] sm:$0xff]
  %v349 = vld [vmem:[#allocation2 + $0xe1] sm:$0xff]
  %v350 = vld [vmem:[#allocation2 + $0xf1] sm:$0xff]
  %v351 = vld [vmem:[#allocation2 + $0xf9] sm:$0xff]
  %v352 = vld [vmem:[#allocation2 + $0x109] sm:$0xff]
  %v353 = vld [vmem:[#allocation2 + $0x111] sm:$0xff]
  %v354 = vld [vmem:[#allocation2 + $0x121] sm:$0xff]
  %v355 = vld [vmem:[#allocation2 + $0x129] sm:$0xff]
  %v356 = vld [vmem:[#allocation2 + $0x139] sm:$0xff]
  %v357 = vld [vmem:[#allocation2 + $0x141] sm:$0xff]
  %v358 = vld [vmem:[#allocation2 + $0x151] sm:$0xff]
  %v359 = vld [vmem:[#allocation2 + $0x159] sm:$0xff]
  %v360 = vld [vmem:[#allocation2 + $0x169] sm:$0xff]
  %v361 = vld [vmem:[#allocation2 + $0x171] sm:$0xff]
  %v362 = vld [vmem:[#allocation2 + $0x1b1] sm:$0xff]
  %v363 = vld [vmem:[#allocation2 + $0x1b9] sm:$0xff]
  %v364 = vld [vmem:[#allocation2 + $0x1c9] sm:$0xff]
  %v365 = vld [vmem:[#allocation2 + $0x1d1] sm:$0xff]
  %v366 = vld [vmem:[#allocation2 + $0x1e1] sm:$0xff]
  %v367 = vld [vmem:[#allocation2 + $0x1e9] sm:$0xff]
  %v368 = vld [vmem:[#allocation2 + $0x1f9] sm:$0xff]
  %v369 = vld [vmem:[#allocation2 + $0x201] sm:$0xff]
  %v370 = vld [vmem:[#allocation2 + $0x211] sm:$0xff]
  %v371 = vld [vmem:[#allocation2 + $0x219] sm:$0xff]
  %v372 = vld [vmem:[#allocation2 + $0x229] sm:$0xff]
  %v373 = vld [vmem:[#allocation2 + $0x231] sm:$0xff]
  %v374 = vld [vmem:[#allocation2 + $0x241] sm:$0xff]
  %v375 = vld [vmem:[#allocation2 + $0x249] sm:$0xff]
  %v376 = vld [vmem:[#allocation2 + $0x259] sm:$0xff]
  %v377 = vld [vmem:[#allocation2 + $0x261] sm:$0xff]
  %v378 = vld [vmem:[#allocation2 + $0x271] sm:$0xff]
  %v379 = vld [vmem:[#allocation2 + $0x279] sm:$0xff]
  %v380 = vld [vmem:[#allocation2 + $0x289] sm:$0xff]
  %v381 = vld [vmem:[#allocation2 + $0x291] sm:$0xff]
  %v382 = vld [vmem:[#allocation2 + $0x2a1] sm:$0xff]
  %v383 = vld [vmem:[#allocation2 + $0x2a9] sm:$0xff]
  %v384 = vld [vmem:[#allocation2 + $0x2b9] sm:$0xff]
  %v385 = vld [vmem:[#allocation2 + $0x2c1] sm:$0xff]
  %v386 = vld [vmem:[#allocation2 + $0x2d1] sm:$0xff]
  %v387 = vld [vmem:[#allocation2 + $0x2d9] sm:$0xff]
  %v388 = vld [vmem:[#allocation2 + $0x2e9] sm:$0xff]
  %v389 = vld [vmem:[#allocation2 + $0x2f1] sm:$0xff]
  %v390 = vld [vmem:[#allocation2 + $0x301] sm:$0xff]
  %v391 = vld [vmem:[#allocation2 + $0x309] sm:$0xff]
  %v392 = vld [vmem:[#allocation2 + $0x319] sm:$0xff]
  %v393 = vld [vmem:[#allocation2 + $0x321] sm:$0xff]
  %s394 = scalar_lea.vmem %s1, 4
  %v395 = vld [vmem:[%s394] sm:$0xf]
  %v397 = vsel %vm26, %v330, 0
  %v400 = vsel %vm26, %v331, 0
  %v403 = vsel %vm26, %v332, 0
  %v406 = vsel %vm26, %v333, 0
  %v409 = vsel %vm26, %v334, 0
  %v412 = vsel %vm26, %v335, 0
  %v415 = vsel %vm26, %v336, 0
  %v418 = vsel %vm26, %v337, 0
  %v421 = vsel %vm26, %v338, 0
  %v424 = vsel %vm26, %v339, 0
  %v427 = vsel %vm26, %v340, 0
  %v430 = vsel %vm26, %v341, 0
  %v433 = vsel %vm26, %v342, 0
  %v436 = vsel %vm26, %v343, 0
  %v439 = vsel %vm26, %v344, 0
  %v442 = vsel %vm26, %v345, 0
  %v445 = vsel %vm26, %v346, 0
  %v448 = vsel %vm26, %v347, 0
  %v451 = vsel %vm26, %v348, 0
  %v454 = vsel %vm26, %v349, 0
  %v457 = vsel %vm26, %v350, 0
  %v460 = vsel %vm26, %v351, 0
  %v463 = vsel %vm26, %v352, 0
  %v466 = vsel %vm26, %v353, 0
  %v469 = vsel %vm26, %v354, 0
  %v472 = vsel %vm26, %v355, 0
  %v475 = vsel %vm26, %v356, 0
  %v478 = vsel %vm26, %v357, 0
  %v481 = vsel %vm26, %v358, 0
  %v484 = vsel %vm26, %v359, 0
  %v487 = vsel %vm26, %v360, 0
  %v490 = vsel %vm26, %v361, 0
  %v493 = vsel %vm26, %v362, 0
  %v496 = vsel %vm26, %v363, 0
  %v499 = vsel %vm26, %v364, 0
  %v502 = vsel %vm26, %v365, 0
  %v505 = vsel %vm26, %v366, 0
  %v508 = vsel %vm26, %v367, 0
  %v511 = vsel %vm26, %v368, 0
  %v514 = vsel %vm26, %v369, 0
  %v517 = vsel %vm26, %v370, 0
  %v520 = vsel %vm26, %v371, 0
  %v523 = vsel %vm26, %v372, 0
  %v526 = vsel %vm26, %v373, 0
  %v529 = vsel %vm26, %v374, 0
  %v532 = vsel %vm26, %v375, 0
  %v535 = vsel %vm26, %v376, 0
  %v538 = vsel %vm26, %v377, 0
  %v541 = vsel %vm26, %v378, 0
  %v544 = vsel %vm26, %v379, 0
  %v547 = vsel %vm26, %v380, 0
  %v550 = vsel %vm26, %v381, 0
  %v553 = vsel %vm26, %v382, 0
  %v556 = vsel %vm26, %v383, 0
  %v559 = vsel %vm26, %v384, 0
  %v562 = vsel %vm26, %v385, 0
  %v565 = vsel %vm26, %v386, 0
  %v568 = vsel %vm26, %v387, 0
  %v571 = vsel %vm26, %v388, 0
  %v574 = vsel %vm26, %v389, 0
  %v577 = vsel %vm26, %v390, 0
  %v580 = vsel %vm26, %v391, 0
  %v583 = vsel %vm26, %v392, 0
  %v586 = vsel %vm26, %v393, 0
  %vm588 = vcmask 1043456
  %v590 = vsel %vm588, %v395, 0
  %592 = vmatprep.subr.mxu0 0.0
  %593 = vmatpush1.msra.mxu0 %v590
  %594 = vmatprep.subr.mxu0 0.0
  %595 = vmatpush1.msra.mxu0 0.0
  %596 = vmatprep.subr.mxu0 0.0
  %597 = vmatpush1.msra.mxu0 0.0
  %598 = vmatprep.subr.mxu0 0.0
  %599 = vmatpush1.msra.mxu0 0.0
  %600 = vmatprep.subr.mxu0 0.0
  %601 = vmatpush1.msra.mxu0 0.0
  %602 = vmatprep.subr.mxu0 0.0
  %603 = vmatpush1.msra.mxu0 0.0
  %604 = vmatprep.subr.mxu0 0.0
  %605 = vmatpush1.msra.mxu0 0.0
  %606 = vmatprep.subr.mxu0 0.0
  %607 = vmatpush1.msra.mxu0 0.0
  %608 = vmatprep.subr.mxu0 0.0
  %609 = vmatpush1.msra.mxu0 0.0
  %610 = vmatprep.subr.mxu0 0.0
  %611 = vmatpush1.msra.mxu0 0.0
  %612 = vmatprep.subr.mxu0 0.0
  %613 = vmatpush1.msra.mxu0 0.0
  %614 = vmatprep.subr.mxu0 0.0
  %615 = vmatpush1.msra.mxu0 0.0
  %616 = vmatprep.subr.mxu0 0.0
  %617 = vmatpush1.msra.mxu0 0.0
  %618 = vmatprep.subr.mxu0 0.0
  %619 = vmatpush1.msra.mxu0 0.0
  %620 = vmatprep.subr.mxu0 0.0
  %621 = vmatpush1.msra.mxu0 0.0
  %622 = vmatprep.subr.mxu0 0.0
  %623 = vmatpush1.msra.mxu0 0.0
  %624 = vmatprep.subr.mxu0 0.0
  %625 = vmatpush1.msra.mxu0 0.0
  %626 = vmatprep.subr.mxu0 0.0
  %627 = vmatpush1.msra.mxu0 0.0
  %628 = vmatprep.subr.mxu0 0.0
  %629 = vmatpush1.msra.mxu0 0.0
  %630 = vmatprep.subr.mxu0 0.0
  %631 = vmatpush1.msra.mxu0 0.0
  %632 = vmatprep.subr.mxu0 0.0
  %633 = vmatpush1.msra.mxu0 0.0
  %634 = vmatprep.subr.mxu0 0.0
  %635 = vmatpush1.msra.mxu0 0.0
  %636 = vmatprep.subr.mxu0 0.0
  %637 = vmatpush1.msra.mxu0 0.0
  %638 = vmatprep.subr.mxu0 0.0
  %639 = vmatpush1.msra.mxu0 0.0
  %640 = vmatprep.subr.mxu0 0.0
  %641 = vmatpush1.msra.mxu0 0.0
  %642 = vmatprep.subr.mxu0 0.0
  %643 = vmatpush1.msra.mxu0 0.0
  %644 = vmatprep.subr.mxu0 0.0
  %645 = vmatpush1.msra.mxu0 0.0
  %646 = vmatprep.subr.mxu0 0.0
  %647 = vmatpush1.msra.mxu0 0.0
  %648 = vmatprep.subr.mxu0 0.0
  %649 = vmatpush1.msra.mxu0 0.0
  %650 = vmatprep.subr.mxu0 0.0
  %651 = vmatpush1.msra.mxu0 0.0
  %652 = vmatprep.subr.mxu0 0.0
  %653 = vmatpush1.msra.mxu0 0.0
  %654 = vmatprep.subr.mxu0 0.0
  %655 = vmatpush1.msra.mxu0 0.0
  %656 = vmatprep.mubr.f32.mxu0 0.0
  %657 = vmatmul.mubr.f32.gmra.mrb[0].mxu0 %v397
  %v658 = vpop.f32.mrb[0].mxu0
  %v659 = vadd.f32 0.0, %v658
  %v660 = vpop.f32.mrb[0].mxu0
  %661 = vmatprep.mubr.f32.mxu0 0.0
  %662 = vmatmul.mubr.f32.gmra.mrb[0].mxu0 %v400
  %v663 = vpop.f32.mrb[0].mxu0
  %v664 = vadd.f32 0.0, %v663
  %v665 = vpop.f32.mrb[0].mxu0
  %666 = vmatprep.mubr.f32.mxu0 0.0
  %667 = vmatmul.mubr.f32.gmra.mrb[0].mxu0 %v403
  %v668 = vpop.f32.mrb[0].mxu0
  %v669 = vadd.f32 0.0, %v668
  %v670 = vpop.f32.mrb[0].mxu0
  %671 = vmatprep.mubr.f32.mxu0 0.0
  %672 = vmatmul.mubr.f32.gmra.mrb[0].mxu0 %v406
  %v673 = vpop.f32.mrb[0].mxu0
  %v674 = vadd.f32 0.0, %v673
  %v675 = vpop.f32.mrb[0].mxu0
  %676 = vmatprep.mubr.f32.mxu0 0.0
  %677 = vmatmul.mubr.f32.gmra.mrb[0].mxu0 %v409
  %v678 = vpop.f32.mrb[0].mxu0
  %v679 = vadd.f32 0.0, %v678
  %v680 = vpop.f32.mrb[0].mxu0
  %681 = vmatprep.mubr.f32.mxu0 0.0
  %682 = vmatmul.mubr.f32.gmra.mrb[0].mxu0 %v412
  %v683 = vpop.f32.mrb[0].mxu0
  %v684 = vadd.f32 0.0, %v683
  %v685 = vpop.f32.mrb[0].mxu0
  %686 = vmatprep.mubr.f32.mxu0 0.0
  %687 = vmatmul.mubr.f32.gmra.mrb[0].mxu0 %v415
  %v688 = vpop.f32.mrb[0].mxu0
  %v689 = vadd.f32 0.0, %v688
  %v690 = vpop.f32.mrb[0].mxu0
  %691 = vmatprep.mubr.f32.mxu0 0.0
  %692 = vmatmul.mubr.f32.gmra.mrb[0].mxu0 %v418
  %v693 = vpop.f32.mrb[0].mxu0
  %v694 = vadd.f32 0.0, %v693
  %v695 = vpop.f32.mrb[0].mxu0
  %696 = vmatprep.mubr.f32.mxu0 0.0
  %697 = vmatmul.mubr.f32.gmra.mrb[0].mxu0 %v421
  %v698 = vpop.f32.mrb[0].mxu0
  %v699 = vadd.f32 0.0, %v698
  %v700 = vpop.f32.mrb[0].mxu0
  %701 = vmatprep.mubr.f32.mxu0 0.0
  %702 = vmatmul.mubr.f32.gmra.mrb[0].mxu0 %v424
  %v703 = vpop.f32.mrb[0].mxu0
  %v704 = vadd.f32 0.0, %v703
  %v705 = vpop.f32.mrb[0].mxu0
  %706 = vmatprep.mubr.f32.mxu0 0.0
  %707 = vmatmul.mubr.f32.gmra.mrb[0].mxu0 %v427
  %v708 = vpop.f32.mrb[0].mxu0
  %v709 = vadd.f32 0.0, %v708
  %v710 = vpop.f32.mrb[0].mxu0
  %711 = vmatprep.mubr.f32.mxu0 0.0
  %712 = vmatmul.mubr.f32.gmra.mrb[0].mxu0 %v430
  %v713 = vpop.f32.mrb[0].mxu0
  %v714 = vadd.f32 0.0, %v713
  %v715 = vpop.f32.mrb[0].mxu0
  %716 = vmatprep.mubr.f32.mxu0 0.0
  %717 = vmatmul.mubr.f32.gmra.mrb[0].mxu0 %v433
  %v718 = vpop.f32.mrb[0].mxu0
  %v719 = vadd.f32 0.0, %v718
  %v720 = vpop.f32.mrb[0].mxu0
  %721 = vmatprep.mubr.f32.mxu0 0.0
  %722 = vmatmul.mubr.f32.gmra.mrb[0].mxu0 %v436
  %v723 = vpop.f32.mrb[0].mxu0
  %v724 = vadd.f32 0.0, %v723
  %v725 = vpop.f32.mrb[0].mxu0
  %726 = vmatprep.mubr.f32.mxu0 0.0
  %727 = vmatmul.mubr.f32.gmra.mrb[0].mxu0 %v439
  %v728 = vpop.f32.mrb[0].mxu0
  %v729 = vadd.f32 0.0, %v728
  %v730 = vpop.f32.mrb[0].mxu0
  %731 = vmatprep.mubr.f32.mxu0 0.0
  %732 = vmatmul.mubr.f32.gmra.mrb[0].mxu0 %v442
  %v733 = vpop.f32.mrb[0].mxu0
  %v734 = vadd.f32 0.0, %v733
  %v735 = vpop.f32.mrb[0].mxu0
  %736 = vmatprep.mubr.f32.mxu0 0.0
  %737 = vmatmul.mubr.f32.gmra.mrb[0].mxu0 %v445
  %v738 = vpop.f32.mrb[0].mxu0
  %v739 = vadd.f32 0.0, %v738
  %v740 = vpop.f32.mrb[0].mxu0
  %741 = vmatprep.mubr.f32.mxu0 0.0
  %742 = vmatmul.mubr.f32.gmra.mrb[0].mxu0 %v448
  %v743 = vpop.f32.mrb[0].mxu0
  %v744 = vadd.f32 0.0, %v743
  %v745 = vpop.f32.mrb[0].mxu0
  %746 = vmatprep.mubr.f32.mxu0 0.0
  %747 = vmatmul.mubr.f32.gmra.mrb[0].mxu0 %v451
  %v748 = vpop.f32.mrb[0].mxu0
  %v749 = vadd.f32 0.0, %v748
  %v750 = vpop.f32.mrb[0].mxu0
  %751 = vmatprep.mubr.f32.mxu0 0.0
  %752 = vmatmul.mubr.f32.gmra.mrb[0].mxu0 %v454
  %v753 = vpop.f32.mrb[0].mxu0
  %v754 = vadd.f32 0.0, %v753
  %v755 = vpop.f32.mrb[0].mxu0
  %756 = vmatprep.mubr.f32.mxu0 0.0
  %757 = vmatmul.mubr.f32.gmra.mrb[0].mxu0 %v457
  %v758 = vpop.f32.mrb[0].mxu0
  %v759 = vadd.f32 0.0, %v758
  %v760 = vpop.f32.mrb[0].mxu0
  %761 = vmatprep.mubr.f32.mxu0 0.0
  %762 = vmatmul.mubr.f32.gmra.mrb[0].mxu0 %v460
  %v763 = vpop.f32.mrb[0].mxu0
  %v764 = vadd.f32 0.0, %v763
  %v765 = vpop.f32.mrb[0].mxu0
  %766 = vmatprep.mubr.f32.mxu0 0.0
  %767 = vmatmul.mubr.f32.gmra.mrb[0].mxu0 %v463
  %v768 = vpop.f32.mrb[0].mxu0
  %v769 = vadd.f32 0.0, %v768
  %v770 = vpop.f32.mrb[0].mxu0
  %771 = vmatprep.mubr.f32.mxu0 0.0
  %772 = vmatmul.mubr.f32.gmra.mrb[0].mxu0 %v466
  %v773 = vpop.f32.mrb[0].mxu0
  %v774 = vadd.f32 0.0, %v773
  %v775 = vpop.f32.mrb[0].mxu0
  %776 = vmatprep.mubr.f32.mxu0 0.0
  %777 = vmatmul.mubr.f32.gmra.mrb[0].mxu0 %v469
  %v778 = vpop.f32.mrb[0].mxu0
  %v779 = vadd.f32 0.0, %v778
  %v780 = vpop.f32.mrb[0].mxu0
  %781 = vmatprep.mubr.f32.mxu0 0.0
  %782 = vmatmul.mubr.f32.gmra.mrb[0].mxu0 %v472
  %v783 = vpop.f32.mrb[0].mxu0
  %v784 = vadd.f32 0.0, %v783
  %v785 = vpop.f32.mrb[0].mxu0
  %786 = vmatprep.mubr.f32.mxu0 0.0
  %787 = vmatmul.mubr.f32.gmra.mrb[0].mxu0 %v475
  %v788 = vpop.f32.mrb[0].mxu0
  %v789 = vadd.f32 0.0, %v788
  %v790 = vpop.f32.mrb[0].mxu0
  %791 = vmatprep.mubr.f32.mxu0 0.0
  %792 = vmatmul.mubr.f32.gmra.mrb[0].mxu0 %v478
  %v793 = vpop.f32.mrb[0].mxu0
  %v794 = vadd.f32 0.0, %v793
  %v795 = vpop.f32.mrb[0].mxu0
  %796 = vmatprep.mubr.f32.mxu0 0.0
  %797 = vmatmul.mubr.f32.gmra.mrb[0].mxu0 %v481
  %v798 = vpop.f32.mrb[0].mxu0
  %v799 = vadd.f32 0.0, %v798
  %v800 = vpop.f32.mrb[0].mxu0
  %801 = vmatprep.mubr.f32.mxu0 0.0
  %802 = vmatmul.mubr.f32.gmra.mrb[0].mxu0 %v484
  %v803 = vpop.f32.mrb[0].mxu0
  %v804 = vadd.f32 0.0, %v803
  %v805 = vpop.f32.mrb[0].mxu0
  %806 = vmatprep.mubr.f32.mxu0 0.0
  %807 = vmatmul.mubr.f32.gmra.mrb[0].mxu0 %v487
  %v808 = vpop.f32.mrb[0].mxu0
  %v809 = vadd.f32 0.0, %v808
  %v810 = vpop.f32.mrb[0].mxu0
  %811 = vmatprep.mubr.f32.mxu0 0.0
  %812 = vmatmul.mubr.f32.gmra.mrb[0].mxu0 %v490
  %v813 = vpop.f32.mrb[0].mxu0
  %v814 = vadd.f32 0.0, %v813
  %v815 = vpop.f32.mrb[0].mxu0
  %816 = vmatprep.mubr.f32.mxu0 0.0
  %817 = vmatmul.mubr.f32.gmra.mrb[0].mxu0 %v493
  %v818 = vpop.f32.mrb[0].mxu0
  %v819 = vadd.f32 0.0, %v818
  %v820 = vpop.f32.mrb[0].mxu0
  %821 = vmatprep.mubr.f32.mxu0 0.0
  %822 = vmatmul.mubr.f32.gmra.mrb[0].mxu0 %v496
  %v823 = vpop.f32.mrb[0].mxu0
  %v824 = vadd.f32 0.0, %v823
  %v825 = vpop.f32.mrb[0].mxu0
  %826 = vmatprep.mubr.f32.mxu0 0.0
  %827 = vmatmul.mubr.f32.gmra.mrb[0].mxu0 %v499
  %v828 = vpop.f32.mrb[0].mxu0
  %v829 = vadd.f32 0.0, %v828
  %v830 = vpop.f32.mrb[0].mxu0
  %831 = vmatprep.mubr.f32.mxu0 0.0
  %832 = vmatmul.mubr.f32.gmra.mrb[0].mxu0 %v502
  %v833 = vpop.f32.mrb[0].mxu0
  %v834 = vadd.f32 0.0, %v833
  %v835 = vpop.f32.mrb[0].mxu0
  %836 = vmatprep.mubr.f32.mxu0 0.0
  %837 = vmatmul.mubr.f32.gmra.mrb[0].mxu0 %v505
  %v838 = vpop.f32.mrb[0].mxu0
  %v839 = vadd.f32 0.0, %v838
  %v840 = vpop.f32.mrb[0].mxu0
  %841 = vmatprep.mubr.f32.mxu0 0.0
  %842 = vmatmul.mubr.f32.gmra.mrb[0].mxu0 %v508
  %v843 = vpop.f32.mrb[0].mxu0
  %v844 = vadd.f32 0.0, %v843
  %v845 = vpop.f32.mrb[0].mxu0
  %846 = vmatprep.mubr.f32.mxu0 0.0
  %847 = vmatmul.mubr.f32.gmra.mrb[0].mxu0 %v511
  %v848 = vpop.f32.mrb[0].mxu0
  %v849 = vadd.f32 0.0, %v848
  %v850 = vpop.f32.mrb[0].mxu0
  %851 = vmatprep.mubr.f32.mxu0 0.0
  %852 = vmatmul.mubr.f32.gmra.mrb[0].mxu0 %v514
  %v853 = vpop.f32.mrb[0].mxu0
  %v854 = vadd.f32 0.0, %v853
  %v855 = vpop.f32.mrb[0].mxu0
  %856 = vmatprep.mubr.f32.mxu0 0.0
  %857 = vmatmul.mubr.f32.gmra.mrb[0].mxu0 %v517
  %v858 = vpop.f32.mrb[0].mxu0
  %v859 = vadd.f32 0.0, %v858
  %v860 = vpop.f32.mrb[0].mxu0
  %861 = vmatprep.mubr.f32.mxu0 0.0
  %862 = vmatmul.mubr.f32.gmra.mrb[0].mxu0 %v520
  %v863 = vpop.f32.mrb[0].mxu0
  %v864 = vadd.f32 0.0, %v863
  %v865 = vpop.f32.mrb[0].mxu0
  %866 = vmatprep.mubr.f32.mxu0 0.0
  %867 = vmatmul.mubr.f32.gmra.mrb[0].mxu0 %v523
  %v868 = vpop.f32.mrb[0].mxu0
  %v869 = vadd.f32 0.0, %v868
  %v870 = vpop.f32.mrb[0].mxu0
  %871 = vmatprep.mubr.f32.mxu0 0.0
  %872 = vmatmul.mubr.f32.gmra.mrb[0].mxu0 %v526
  %v873 = vpop.f32.mrb[0].mxu0
  %v874 = vadd.f32 0.0, %v873
  %v875 = vpop.f32.mrb[0].mxu0
  %876 = vmatprep.mubr.f32.mxu0 0.0
  %877 = vmatmul.mubr.f32.gmra.mrb[0].mxu0 %v529
  %v878 = vpop.f32.mrb[0].mxu0
  %v879 = vadd.f32 0.0, %v878
  %v880 = vpop.f32.mrb[0].mxu0
  %881 = vmatprep.mubr.f32.mxu0 0.0
  %882 = vmatmul.mubr.f32.gmra.mrb[0].mxu0 %v532
  %v883 = vpop.f32.mrb[0].mxu0
  %v884 = vadd.f32 0.0, %v883
  %v885 = vpop.f32.mrb[0].mxu0
  %886 = vmatprep.mubr.f32.mxu0 0.0
  %887 = vmatmul.mubr.f32.gmra.mrb[0].mxu0 %v535
  %v888 = vpop.f32.mrb[0].mxu0
  %v889 = vadd.f32 0.0, %v888
  %v890 = vpop.f32.mrb[0].mxu0
  %891 = vmatprep.mubr.f32.mxu0 0.0
  %892 = vmatmul.mubr.f32.gmra.mrb[0].mxu0 %v538
  %v893 = vpop.f32.mrb[0].mxu0
  %v894 = vadd.f32 0.0, %v893
  %v895 = vpop.f32.mrb[0].mxu0
  %896 = vmatprep.mubr.f32.mxu0 0.0
  %897 = vmatmul.mubr.f32.gmra.mrb[0].mxu0 %v541
  %v898 = vpop.f32.mrb[0].mxu0
  %v899 = vadd.f32 0.0, %v898
  %v900 = vpop.f32.mrb[0].mxu0
  %901 = vmatprep.mubr.f32.mxu0 0.0
  %902 = vmatmul.mubr.f32.gmra.mrb[0].mxu0 %v544
  %v903 = vpop.f32.mrb[0].mxu0
  %v904 = vadd.f32 0.0, %v903
  %v905 = vpop.f32.mrb[0].mxu0
  %906 = vmatprep.mubr.f32.mxu0 0.0
  %907 = vmatmul.mubr.f32.gmra.mrb[0].mxu0 %v547
  %v908 = vpop.f32.mrb[0].mxu0
  %v909 = vadd.f32 0.0, %v908
  %v910 = vpop.f32.mrb[0].mxu0
  %911 = vmatprep.mubr.f32.mxu0 0.0
  %912 = vmatmul.mubr.f32.gmra.mrb[0].mxu0 %v550
  %v913 = vpop.f32.mrb[0].mxu0
  %v914 = vadd.f32 0.0, %v913
  %v915 = vpop.f32.mrb[0].mxu0
  %916 = vmatprep.mubr.f32.mxu0 0.0
  %917 = vmatmul.mubr.f32.gmra.mrb[0].mxu0 %v553
  %v918 = vpop.f32.mrb[0].mxu0
  %v919 = vadd.f32 0.0, %v918
  %v920 = vpop.f32.mrb[0].mxu0
  %921 = vmatprep.mubr.f32.mxu0 0.0
  %922 = vmatmul.mubr.f32.gmra.mrb[0].mxu0 %v556
  %v923 = vpop.f32.mrb[0].mxu0
  %v924 = vadd.f32 0.0, %v923
  %v925 = vpop.f32.mrb[0].mxu0
  %926 = vmatprep.mubr.f32.mxu0 0.0
  %927 = vmatmul.mubr.f32.gmra.mrb[0].mxu0 %v559
  %v928 = vpop.f32.mrb[0].mxu0
  %v929 = vadd.f32 0.0, %v928
  %v930 = vpop.f32.mrb[0].mxu0
  %931 = vmatprep.mubr.f32.mxu0 0.0
  %932 = vmatmul.mubr.f32.gmra.mrb[0].mxu0 %v562
  %v933 = vpop.f32.mrb[0].mxu0
  %v934 = vadd.f32 0.0, %v933
  %v935 = vpop.f32.mrb[0].mxu0
  %936 = vmatprep.mubr.f32.mxu0 0.0
  %937 = vmatmul.mubr.f32.gmra.mrb[0].mxu0 %v565
  %v938 = vpop.f32.mrb[0].mxu0
  %v939 = vadd.f32 0.0, %v938
  %v940 = vpop.f32.mrb[0].mxu0
  %941 = vmatprep.mubr.f32.mxu0 0.0
  %942 = vmatmul.mubr.f32.gmra.mrb[0].mxu0 %v568
  %v943 = vpop.f32.mrb[0].mxu0
  %v944 = vadd.f32 0.0, %v943
  %v945 = vpop.f32.mrb[0].mxu0
  %946 = vmatprep.mubr.f32.mxu0 0.0
  %947 = vmatmul.mubr.f32.gmra.mrb[0].mxu0 %v571
  %v948 = vpop.f32.mrb[0].mxu0
  %v949 = vadd.f32 0.0, %v948
  %v950 = vpop.f32.mrb[0].mxu0
  %951 = vmatprep.mubr.f32.mxu0 0.0
  %952 = vmatmul.mubr.f32.gmra.mrb[0].mxu0 %v574
  %v953 = vpop.f32.mrb[0].mxu0
  %v954 = vadd.f32 0.0, %v953
  %v955 = vpop.f32.mrb[0].mxu0
  %956 = vmatprep.mubr.f32.mxu0 0.0
  %957 = vmatmul.mubr.f32.gmra.mrb[0].mxu0 %v577
  %v958 = vpop.f32.mrb[0].mxu0
  %v959 = vadd.f32 0.0, %v958
  %v960 = vpop.f32.mrb[0].mxu0
  %961 = vmatprep.mubr.f32.mxu0 0.0
  %962 = vmatmul.mubr.f32.gmra.mrb[0].mxu0 %v580
  %v963 = vpop.f32.mrb[0].mxu0
  %v964 = vadd.f32 0.0, %v963
  %v965 = vpop.f32.mrb[0].mxu0
  %966 = vmatprep.mubr.f32.mxu0 0.0
  %967 = vmatmul.mubr.f32.gmra.mrb[0].mxu0 %v583
  %v968 = vpop.f32.mrb[0].mxu0
  %v969 = vadd.f32 0.0, %v968
  %v970 = vpop.f32.mrb[0].mxu0
  %971 = vmatprep.mubr.f32.mxu0 0.0
  %972 = vmatmul.mubr.f32.gmra.mrb[0].mxu0 %v586
  %v973 = vpop.f32.mrb[0].mxu0
  %v974 = vadd.f32 0.0, %v973
  %v975 = vpop.f32.mrb[0].mxu0
  %976 = vdwg.mxu0
  %v978 = vsel %vm26, %v265, 0
  %v981 = vsel %vm26, %v266, 0
  %v984 = vsel %vm26, %v267, 0
  %v987 = vsel %vm26, %v268, 0
  %v990 = vsel %vm26, %v269, 0
  %v993 = vsel %vm26, %v270, 0
  %v996 = vsel %vm26, %v271, 0
  %v999 = vsel %vm26, %v272, 0
  %v1002 = vsel %vm26, %v273, 0
  %v1005 = vsel %vm26, %v274, 0
  %v1008 = vsel %vm26, %v275, 0
  %v1011 = vsel %vm26, %v276, 0
  %v1014 = vsel %vm26, %v277, 0
  %v1017 = vsel %vm26, %v278, 0
  %v1020 = vsel %vm26, %v279, 0
  %v1023 = vsel %vm26, %v280, 0
  %v1026 = vsel %vm26, %v281, 0
  %v1029 = vsel %vm26, %v282, 0
  %v1032 = vsel %vm26, %v283, 0
  %v1035 = vsel %vm26, %v284, 0
  %v1038 = vsel %vm26, %v285, 0
  %v1041 = vsel %vm26, %v286, 0
  %v1044 = vsel %vm26, %v287, 0
  %v1047 = vsel %vm26, %v288, 0
  %v1050 = vsel %vm26, %v289, 0
  %v1053 = vsel %vm26, %v290, 0
  %v1056 = vsel %vm26, %v291, 0
  %v1059 = vsel %vm26, %v292, 0
  %v1062 = vsel %vm26, %v293, 0
  %v1065 = vsel %vm26, %v294, 0
  %v1068 = vsel %vm26, %v295, 0
  %v1071 = vsel %vm26, %v296, 0
  %v1074 = vsel %vm26, %v297, 0
  %v1077 = vsel %vm26, %v298, 0
  %v1080 = vsel %vm26, %v299, 0
  %v1083 = vsel %vm26, %v300, 0
  %v1086 = vsel %vm26, %v301, 0
  %v1089 = vsel %vm26, %v302, 0
  %v1092 = vsel %vm26, %v303, 0
  %v1095 = vsel %vm26, %v304, 0
  %v1098 = vsel %vm26, %v305, 0
  %v1101 = vsel %vm26, %v306, 0
  %v1104 = vsel %vm26, %v307, 0
  %v1107 = vsel %vm26, %v308, 0
  %v1110 = vsel %vm26, %v309, 0
  %v1113 = vsel %vm26, %v310, 0
  %v1116 = vsel %vm26, %v311, 0
  %v1119 = vsel %vm26, %v312, 0
  %v1122 = vsel %vm26, %v313, 0
  %v1125 = vsel %vm26, %v314, 0
  %v1128 = vsel %vm26, %v315, 0
  %v1131 = vsel %vm26, %v316, 0
  %v1134 = vsel %vm26, %v317, 0
  %v1137 = vsel %vm26, %v318, 0
  %v1140 = vsel %vm26, %v319, 0
  %v1143 = vsel %vm26, %v320, 0
  %v1146 = vsel %vm26, %v321, 0
  %v1149 = vsel %vm26, %v322, 0
  %v1152 = vsel %vm26, %v323, 0
  %v1155 = vsel %vm26, %v324, 0
  %v1158 = vsel %vm26, %v325, 0
  %v1161 = vsel %vm26, %v326, 0
  %v1164 = vsel %vm26, %v327, 0
  %v1167 = vsel %vm26, %v328, 0
  %v1170 = vsel %vm588, %v329, 0
  %1172 = vmatprep.subr.mxu0 0.0
  %1173 = vmatpush1.msra.mxu0 %v1170
  %1174 = vmatprep.subr.mxu0 0.0
  %1175 = vmatpush1.msra.mxu0 0.0
  %1176 = vmatprep.subr.mxu0 0.0
  %1177 = vmatpush1.msra.mxu0 0.0
  %1178 = vmatprep.subr.mxu0 0.0
  %1179 = vmatpush1.msra.mxu0 0.0
  %1180 = vmatprep.subr.mxu0 0.0
  %1181 = vmatpush1.msra.mxu0 0.0
  %1182 = vmatprep.subr.mxu0 0.0
  %1183 = vmatpush1.msra.mxu0 0.0
  %1184 = vmatprep.subr.mxu0 0.0
  %1185 = vmatpush1.msra.mxu0 0.0
  %1186 = vmatprep.subr.mxu0 0.0
  %1187 = vmatpush1.msra.mxu0 0.0
  %1188 = vmatprep.subr.mxu0 0.0
  %1189 = vmatpush1.msra.mxu0 0.0
  %1190 = vmatprep.subr.mxu0 0.0
  %1191 = vmatpush1.msra.mxu0 0.0
  %1192 = vmatprep.subr.mxu0 0.0
  %1193 = vmatpush1.msra.mxu0 0.0
  %1194 = vmatprep.subr.mxu0 0.0
  %1195 = vmatpush1.msra.mxu0 0.0
  %1196 = vmatprep.subr.mxu0 0.0
  %1197 = vmatpush1.msra.mxu0 0.0
  %1198 = vmatprep.subr.mxu0 0.0
  %1199 = vmatpush1.msra.mxu0 0.0
  %1200 = vmatprep.subr.mxu0 0.0
  %1201 = vmatpush1.msra.mxu0 0.0
  %1202 = vmatprep.subr.mxu0 0.0
  %1203 = vmatpush1.msra.mxu0 0.0
  %1204 = vmatprep.subr.mxu0 0.0
  %1205 = vmatpush1.msra.mxu0 0.0
  %1206 = vmatprep.subr.mxu0 0.0
  %1207 = vmatpush1.msra.mxu0 0.0
  %1208 = vmatprep.subr.mxu0 0.0
  %1209 = vmatpush1.msra.mxu0 0.0
  %1210 = vmatprep.subr.mxu0 0.0
  %1211 = vmatpush1.msra.mxu0 0.0
  %1212 = vmatprep.subr.mxu0 0.0
  %1213 = vmatpush1.msra.mxu0 0.0
  %1214 = vmatprep.subr.mxu0 0.0
  %1215 = vmatpush1.msra.mxu0 0.0
  %1216 = vmatprep.subr.mxu0 0.0
  %1217 = vmatpush1.msra.mxu0 0.0
  %1218 = vmatprep.subr.mxu0 0.0
  %1219 = vmatpush1.msra.mxu0 0.0
  %1220 = vmatprep.subr.mxu0 0.0
  %1221 = vmatpush1.msra.mxu0 0.0
  %1222 = vmatprep.subr.mxu0 0.0
  %1223 = vmatpush1.msra.mxu0 0.0
  %1224 = vmatprep.subr.mxu0 0.0
  %1225 = vmatpush1.msra.mxu0 0.0
  %1226 = vmatprep.subr.mxu0 0.0
  %1227 = vmatpush1.msra.mxu0 0.0
  %1228 = vmatprep.subr.mxu0 0.0
  %1229 = vmatpush1.msra.mxu0 0.0
  %1230 = vmatprep.subr.mxu0 0.0
  %1231 = vmatpush1.msra.mxu0 0.0
  %1232 = vmatprep.subr.mxu0 0.0
  %1233 = vmatpush1.msra.mxu0 0.0
  %1234 = vmatprep.subr.mxu0 0.0
  %1235 = vmatpush1.msra.mxu0 0.0
  %1236 = vmatprep.mubr.f32.mxu0 0.0
  %1237 = vmatmul.mubr.f32.gmra.mrb[0].mxu0 %v978
  %v1238 = vpop.f32.mrb[0].mxu0
  %v1239 = vadd.f32 %v659, %v1238
  %v1240 = vpop.f32.mrb[0].mxu0
  %1241 = vmatprep.mubr.f32.mxu0 0.0
  %1242 = vmatmul.mubr.f32.gmra.mrb[0].mxu0 %v981
  %v1243 = vpop.f32.mrb[0].mxu0
  %v1244 = vadd.f32 %v664, %v1243
  %v1245 = vpop.f32.mrb[0].mxu0
  %1246 = vmatprep.mubr.f32.mxu0 0.0
  %1247 = vmatmul.mubr.f32.gmra.mrb[0].mxu0 %v984
  %v1248 = vpop.f32.mrb[0].mxu0
  %v1249 = vadd.f32 %v669, %v1248
  %v1250 = vpop.f32.mrb[0].mxu0
  %1251 = vmatprep.mubr.f32.mxu0 0.0
  %1252 = vmatmul.mubr.f32.gmra.mrb[0].mxu0 %v987
  %v1253 = vpop.f32.mrb[0].mxu0
  %v1254 = vadd.f32 %v674, %v1253
  %v1255 = vpop.f32.mrb[0].mxu0
  %1256 = vmatprep.mubr.f32.mxu0 0.0
  %1257 = vmatmul.mubr.f32.gmra.mrb[0].mxu0 %v990
  %v1258 = vpop.f32.mrb[0].mxu0
  %v1259 = vadd.f32 %v679, %v1258
  %v1260 = vpop.f32.mrb[0].mxu0
  %1261 = vmatprep.mubr.f32.mxu0 0.0
  %1262 = vmatmul.mubr.f32.gmra.mrb[0].mxu0 %v993
  %v1263 = vpop.f32.mrb[0].mxu0
  %v1264 = vadd.f32 %v684, %v1263
  %v1265 = vpop.f32.mrb[0].mxu0
  %1266 = vmatprep.mubr.f32.mxu0 0.0
  %1267 = vmatmul.mubr.f32.gmra.mrb[0].mxu0 %v996
  %v1268 = vpop.f32.mrb[0].mxu0
  %v1269 = vadd.f32 %v689, %v1268
  %v1270 = vpop.f32.mrb[0].mxu0
  %1271 = vmatprep.mubr.f32.mxu0 0.0
  %1272 = vmatmul.mubr.f32.gmra.mrb[0].mxu0 %v999
  %v1273 = vpop.f32.mrb[0].mxu0
  %v1274 = vadd.f32 %v694, %v1273
  %v1275 = vpop.f32.mrb[0].mxu0
  %1276 = vmatprep.mubr.f32.mxu0 0.0
  %1277 = vmatmul.mubr.f32.gmra.mrb[0].mxu0 %v1002
  %v1278 = vpop.f32.mrb[0].mxu0
  %v1279 = vadd.f32 %v699, %v1278
  %v1280 = vpop.f32.mrb[0].mxu0
  %1281 = vmatprep.mubr.f32.mxu0 0.0
  %1282 = vmatmul.mubr.f32.gmra.mrb[0].mxu0 %v1005
  %v1283 = vpop.f32.mrb[0].mxu0
  %v1284 = vadd.f32 %v704, %v1283
  %v1285 = vpop.f32.mrb[0].mxu0
  %1286 = vmatprep.mubr.f32.mxu0 0.0
  %1287 = vmatmul.mubr.f32.gmra.mrb[0].mxu0 %v1008
  %v1288 = vpop.f32.mrb[0].mxu0
  %v1289 = vadd.f32 %v709, %v1288
  %v1290 = vpop.f32.mrb[0].mxu0
  %1291 = vmatprep.mubr.f32.mxu0 0.0
  %1292 = vmatmul.mubr.f32.gmra.mrb[0].mxu0 %v1011
  %v1293 = vpop.f32.mrb[0].mxu0
  %v1294 = vadd.f32 %v714, %v1293
  %v1295 = vpop.f32.mrb[0].mxu0
  %1296 = vmatprep.mubr.f32.mxu0 0.0
  %1297 = vmatmul.mubr.f32.gmra.mrb[0].mxu0 %v1014
  %v1298 = vpop.f32.mrb[0].mxu0
  %v1299 = vadd.f32 %v719, %v1298
  %v1300 = vpop.f32.mrb[0].mxu0
  %1301 = vmatprep.mubr.f32.mxu0 0.0
  %1302 = vmatmul.mubr.f32.gmra.mrb[0].mxu0 %v1017
  %v1303 = vpop.f32.mrb[0].mxu0
  %v1304 = vadd.f32 %v724, %v1303
  %v1305 = vpop.f32.mrb[0].mxu0
  %1306 = vmatprep.mubr.f32.mxu0 0.0
  %1307 = vmatmul.mubr.f32.gmra.mrb[0].mxu0 %v1020
  %v1308 = vpop.f32.mrb[0].mxu0
  %v1309 = vadd.f32 %v729, %v1308
  %v1310 = vpop.f32.mrb[0].mxu0
  %1311 = vmatprep.mubr.f32.mxu0 0.0
  %1312 = vmatmul.mubr.f32.gmra.mrb[0].mxu0 %v1023
  %v1313 = vpop.f32.mrb[0].mxu0
  %v1314 = vadd.f32 %v734, %v1313
  %v1315 = vpop.f32.mrb[0].mxu0
  %1316 = vmatprep.mubr.f32.mxu0 0.0
  %1317 = vmatmul.mubr.f32.gmra.mrb[0].mxu0 %v1026
  %v1318 = vpop.f32.mrb[0].mxu0
  %v1319 = vadd.f32 %v739, %v1318
  %v1320 = vpop.f32.mrb[0].mxu0
  %1321 = vmatprep.mubr.f32.mxu0 0.0
  %1322 = vmatmul.mubr.f32.gmra.mrb[0].mxu0 %v1029
  %v1323 = vpop.f32.mrb[0].mxu0
  %v1324 = vadd.f32 %v744, %v1323
  %v1325 = vpop.f32.mrb[0].mxu0
  %1326 = vmatprep.mubr.f32.mxu0 0.0
  %1327 = vmatmul.mubr.f32.gmra.mrb[0].mxu0 %v1032
  %v1328 = vpop.f32.mrb[0].mxu0
  %v1329 = vadd.f32 %v749, %v1328
  %v1330 = vpop.f32.mrb[0].mxu0
  %1331 = vmatprep.mubr.f32.mxu0 0.0
  %1332 = vmatmul.mubr.f32.gmra.mrb[0].mxu0 %v1035
  %v1333 = vpop.f32.mrb[0].mxu0
  %v1334 = vadd.f32 %v754, %v1333
  %v1335 = vpop.f32.mrb[0].mxu0
  %1336 = vmatprep.mubr.f32.mxu0 0.0
  %1337 = vmatmul.mubr.f32.gmra.mrb[0].mxu0 %v1038
  %v1338 = vpop.f32.mrb[0].mxu0
  %v1339 = vadd.f32 %v759, %v1338
  %v1340 = vpop.f32.mrb[0].mxu0
  %1341 = vmatprep.mubr.f32.mxu0 0.0
  %1342 = vmatmul.mubr.f32.gmra.mrb[0].mxu0 %v1041
  %v1343 = vpop.f32.mrb[0].mxu0
  %v1344 = vadd.f32 %v764, %v1343
  %v1345 = vpop.f32.mrb[0].mxu0
  %1346 = vmatprep.mubr.f32.mxu0 0.0
  %1347 = vmatmul.mubr.f32.gmra.mrb[0].mxu0 %v1044
  %v1348 = vpop.f32.mrb[0].mxu0
  %v1349 = vadd.f32 %v769, %v1348
  %v1350 = vpop.f32.mrb[0].mxu0
  %1351 = vmatprep.mubr.f32.mxu0 0.0
  %1352 = vmatmul.mubr.f32.gmra.mrb[0].mxu0 %v1047
  %v1353 = vpop.f32.mrb[0].mxu0
  %v1354 = vadd.f32 %v774, %v1353
  %v1355 = vpop.f32.mrb[0].mxu0
  %1356 = vmatprep.mubr.f32.mxu0 0.0
  %1357 = vmatmul.mubr.f32.gmra.mrb[0].mxu0 %v1050
  %v1358 = vpop.f32.mrb[0].mxu0
  %v1359 = vadd.f32 %v779, %v1358
  %v1360 = vpop.f32.mrb[0].mxu0
  %1361 = vmatprep.mubr.f32.mxu0 0.0
  %1362 = vmatmul.mubr.f32.gmra.mrb[0].mxu0 %v1053
  %v1363 = vpop.f32.mrb[0].mxu0
  %v1364 = vadd.f32 %v784, %v1363
  %v1365 = vpop.f32.mrb[0].mxu0
  %1366 = vmatprep.mubr.f32.mxu0 0.0
  %1367 = vmatmul.mubr.f32.gmra.mrb[0].mxu0 %v1056
  %v1368 = vpop.f32.mrb[0].mxu0
  %v1369 = vadd.f32 %v789, %v1368
  %v1370 = vpop.f32.mrb[0].mxu0
  %1371 = vmatprep.mubr.f32.mxu0 0.0
  %1372 = vmatmul.mubr.f32.gmra.mrb[0].mxu0 %v1059
  %v1373 = vpop.f32.mrb[0].mxu0
  %v1374 = vadd.f32 %v794, %v1373
  %v1375 = vpop.f32.mrb[0].mxu0
  %1376 = vmatprep.mubr.f32.mxu0 0.0
  %1377 = vmatmul.mubr.f32.gmra.mrb[0].mxu0 %v1062
  %v1378 = vpop.f32.mrb[0].mxu0
  %v1379 = vadd.f32 %v799, %v1378
  %v1380 = vpop.f32.mrb[0].mxu0
  %1381 = vmatprep.mubr.f32.mxu0 0.0
  %1382 = vmatmul.mubr.f32.gmra.mrb[0].mxu0 %v1065
  %v1383 = vpop.f32.mrb[0].mxu0
  %v1384 = vadd.f32 %v804, %v1383
  %v1385 = vpop.f32.mrb[0].mxu0
  %1386 = vmatprep.mubr.f32.mxu0 0.0
  %1387 = vmatmul.mubr.f32.gmra.mrb[0].mxu0 %v1068
  %v1388 = vpop.f32.mrb[0].mxu0
  %v1389 = vadd.f32 %v809, %v1388
  %v1390 = vpop.f32.mrb[0].mxu0
  %1391 = vmatprep.mubr.f32.mxu0 0.0
  %1392 = vmatmul.mubr.f32.gmra.mrb[0].mxu0 %v1071
  %v1393 = vpop.f32.mrb[0].mxu0
  %v1394 = vadd.f32 %v814, %v1393
  %v1395 = vpop.f32.mrb[0].mxu0
  %1396 = vmatprep.mubr.f32.mxu0 0.0
  %1397 = vmatmul.mubr.f32.gmra.mrb[0].mxu0 %v1074
  %v1398 = vpop.f32.mrb[0].mxu0
  %v1399 = vadd.f32 %v819, %v1398
  %v1400 = vpop.f32.mrb[0].mxu0
  %1401 = vmatprep.mubr.f32.mxu0 0.0
  %1402 = vmatmul.mubr.f32.gmra.mrb[0].mxu0 %v1077
  %v1403 = vpop.f32.mrb[0].mxu0
  %v1404 = vadd.f32 %v824, %v1403
  %v1405 = vpop.f32.mrb[0].mxu0
  %1406 = vmatprep.mubr.f32.mxu0 0.0
  %1407 = vmatmul.mubr.f32.gmra.mrb[0].mxu0 %v1080
  %v1408 = vpop.f32.mrb[0].mxu0
  %v1409 = vadd.f32 %v829, %v1408
  %v1410 = vpop.f32.mrb[0].mxu0
  %1411 = vmatprep.mubr.f32.mxu0 0.0
  %1412 = vmatmul.mubr.f32.gmra.mrb[0].mxu0 %v1083
  %v1413 = vpop.f32.mrb[0].mxu0
  %v1414 = vadd.f32 %v834, %v1413
  %v1415 = vpop.f32.mrb[0].mxu0
  %1416 = vmatprep.mubr.f32.mxu0 0.0
  %1417 = vmatmul.mubr.f32.gmra.mrb[0].mxu0 %v1086
  %v1418 = vpop.f32.mrb[0].mxu0
  %v1419 = vadd.f32 %v839, %v1418
  %v1420 = vpop.f32.mrb[0].mxu0
  %1421 = vmatprep.mubr.f32.mxu0 0.0
  %1422 = vmatmul.mubr.f32.gmra.mrb[0].mxu0 %v1089
  %v1423 = vpop.f32.mrb[0].mxu0
  %v1424 = vadd.f32 %v844, %v1423
  %v1425 = vpop.f32.mrb[0].mxu0
  %1426 = vmatprep.mubr.f32.mxu0 0.0
  %1427 = vmatmul.mubr.f32.gmra.mrb[0].mxu0 %v1092
  %v1428 = vpop.f32.mrb[0].mxu0
  %v1429 = vadd.f32 %v849, %v1428
  %v1430 = vpop.f32.mrb[0].mxu0
  %1431 = vmatprep.mubr.f32.mxu0 0.0
  %1432 = vmatmul.mubr.f32.gmra.mrb[0].mxu0 %v1095
  %v1433 = vpop.f32.mrb[0].mxu0
  %v1434 = vadd.f32 %v854, %v1433
  %v1435 = vpop.f32.mrb[0].mxu0
  %1436 = vmatprep.mubr.f32.mxu0 0.0
  %1437 = vmatmul.mubr.f32.gmra.mrb[0].mxu0 %v1098
  %v1438 = vpop.f32.mrb[0].mxu0
  %v1439 = vadd.f32 %v859, %v1438
  %v1440 = vpop.f32.mrb[0].mxu0
  %1441 = vmatprep.mubr.f32.mxu0 0.0
  %1442 = vmatmul.mubr.f32.gmra.mrb[0].mxu0 %v1101
  %v1443 = vpop.f32.mrb[0].mxu0
  %v1444 = vadd.f32 %v864, %v1443
  %v1445 = vpop.f32.mrb[0].mxu0
  %1446 = vmatprep.mubr.f32.mxu0 0.0
  %1447 = vmatmul.mubr.f32.gmra.mrb[0].mxu0 %v1104
  %v1448 = vpop.f32.mrb[0].mxu0
  %v1449 = vadd.f32 %v869, %v1448
  %v1450 = vpop.f32.mrb[0].mxu0
  %1451 = vmatprep.mubr.f32.mxu0 0.0
  %1452 = vmatmul.mubr.f32.gmra.mrb[0].mxu0 %v1107
  %v1453 = vpop.f32.mrb[0].mxu0
  %v1454 = vadd.f32 %v874, %v1453
  %v1455 = vpop.f32.mrb[0].mxu0
  %1456 = vmatprep.mubr.f32.mxu0 0.0
  %1457 = vmatmul.mubr.f32.gmra.mrb[0].mxu0 %v1110
  %v1458 = vpop.f32.mrb[0].mxu0
  %v1459 = vadd.f32 %v879, %v1458
  %v1460 = vpop.f32.mrb[0].mxu0
  %1461 = vmatprep.mubr.f32.mxu0 0.0
  %1462 = vmatmul.mubr.f32.gmra.mrb[0].mxu0 %v1113
  %v1463 = vpop.f32.mrb[0].mxu0
  %v1464 = vadd.f32 %v884, %v1463
  %v1465 = vpop.f32.mrb[0].mxu0
  %1466 = vmatprep.mubr.f32.mxu0 0.0
  %1467 = vmatmul.mubr.f32.gmra.mrb[0].mxu0 %v1116
  %v1468 = vpop.f32.mrb[0].mxu0
  %v1469 = vadd.f32 %v889, %v1468
  %v1470 = vpop.f32.mrb[0].mxu0
  %1471 = vmatprep.mubr.f32.mxu0 0.0
  %1472 = vmatmul.mubr.f32.gmra.mrb[0].mxu0 %v1119
  %v1473 = vpop.f32.mrb[0].mxu0
  %v1474 = vadd.f32 %v894, %v1473
  %v1475 = vpop.f32.mrb[0].mxu0
  %1476 = vmatprep.mubr.f32.mxu0 0.0
  %1477 = vmatmul.mubr.f32.gmra.mrb[0].mxu0 %v1122
  %v1478 = vpop.f32.mrb[0].mxu0
  %v1479 = vadd.f32 %v899, %v1478
  %v1480 = vpop.f32.mrb[0].mxu0
  %1481 = vmatprep.mubr.f32.mxu0 0.0
  %1482 = vmatmul.mubr.f32.gmra.mrb[0].mxu0 %v1125
  %v1483 = vpop.f32.mrb[0].mxu0
  %v1484 = vadd.f32 %v904, %v1483
  %v1485 = vpop.f32.mrb[0].mxu0
  %1486 = vmatprep.mubr.f32.mxu0 0.0
  %1487 = vmatmul.mubr.f32.gmra.mrb[0].mxu0 %v1128
  %v1488 = vpop.f32.mrb[0].mxu0
  %v1489 = vadd.f32 %v909, %v1488
  %v1490 = vpop.f32.mrb[0].mxu0
  %1491 = vmatprep.mubr.f32.mxu0 0.0
  %1492 = vmatmul.mubr.f32.gmra.mrb[0].mxu0 %v1131
  %v1493 = vpop.f32.mrb[0].mxu0
  %v1494 = vadd.f32 %v914, %v1493
  %v1495 = vpop.f32.mrb[0].mxu0
  %1496 = vmatprep.mubr.f32.mxu0 0.0
  %1497 = vmatmul.mubr.f32.gmra.mrb[0].mxu0 %v1134
  %v1498 = vpop.f32.mrb[0].mxu0
  %v1499 = vadd.f32 %v919, %v1498
  %v1500 = vpop.f32.mrb[0].mxu0
  %1501 = vmatprep.mubr.f32.mxu0 0.0
  %1502 = vmatmul.mubr.f32.gmra.mrb[0].mxu0 %v1137
  %v1503 = vpop.f32.mrb[0].mxu0
  %v1504 = vadd.f32 %v924, %v1503
  %v1505 = vpop.f32.mrb[0].mxu0
  %1506 = vmatprep.mubr.f32.mxu0 0.0
  %1507 = vmatmul.mubr.f32.gmra.mrb[0].mxu0 %v1140
  %v1508 = vpop.f32.mrb[0].mxu0
  %v1509 = vadd.f32 %v929, %v1508
  %v1510 = vpop.f32.mrb[0].mxu0
  %1511 = vmatprep.mubr.f32.mxu0 0.0
  %1512 = vmatmul.mubr.f32.gmra.mrb[0].mxu0 %v1143
  %v1513 = vpop.f32.mrb[0].mxu0
  %v1514 = vadd.f32 %v934, %v1513
  %v1515 = vpop.f32.mrb[0].mxu0
  %1516 = vmatprep.mubr.f32.mxu0 0.0
  %1517 = vmatmul.mubr.f32.gmra.mrb[0].mxu0 %v1146
  %v1518 = vpop.f32.mrb[0].mxu0
  %v1519 = vadd.f32 %v939, %v1518
  %v1520 = vpop.f32.mrb[0].mxu0
  %1521 = vmatprep.mubr.f32.mxu0 0.0
  %1522 = vmatmul.mubr.f32.gmra.mrb[0].mxu0 %v1149
  %v1523 = vpop.f32.mrb[0].mxu0
  %v1524 = vadd.f32 %v944, %v1523
  %v1525 = vpop.f32.mrb[0].mxu0
  %1526 = vmatprep.mubr.f32.mxu0 0.0
  %1527 = vmatmul.mubr.f32.gmra.mrb[0].mxu0 %v1152
  %v1528 = vpop.f32.mrb[0].mxu0
  %v1529 = vadd.f32 %v949, %v1528
  %v1530 = vpop.f32.mrb[0].mxu0
  %1531 = vmatprep.mubr.f32.mxu0 0.0
  %1532 = vmatmul.mubr.f32.gmra.mrb[0].mxu0 %v1155
  %v1533 = vpop.f32.mrb[0].mxu0
  %v1534 = vadd.f32 %v954, %v1533
  %v1535 = vpop.f32.mrb[0].mxu0
  %1536 = vmatprep.mubr.f32.mxu0 0.0
  %1537 = vmatmul.mubr.f32.gmra.mrb[0].mxu0 %v1158
  %v1538 = vpop.f32.mrb[0].mxu0
  %v1539 = vadd.f32 %v959, %v1538
  %v1540 = vpop.f32.mrb[0].mxu0
  %1541 = vmatprep.mubr.f32.mxu0 0.0
  %1542 = vmatmul.mubr.f32.gmra.mrb[0].mxu0 %v1161
  %v1543 = vpop.f32.mrb[0].mxu0
  %v1544 = vadd.f32 %v964, %v1543
  %v1545 = vpop.f32.mrb[0].mxu0
  %1546 = vmatprep.mubr.f32.mxu0 0.0
  %1547 = vmatmul.mubr.f32.gmra.mrb[0].mxu0 %v1164
  %v1548 = vpop.f32.mrb[0].mxu0
  %v1549 = vadd.f32 %v969, %v1548
  %v1550 = vpop.f32.mrb[0].mxu0
  %1551 = vmatprep.mubr.f32.mxu0 0.0
  %1552 = vmatmul.mubr.f32.gmra.mrb[0].mxu0 %v1167
  %v1553 = vpop.f32.mrb[0].mxu0
  %v1554 = vadd.f32 %v974, %v1553
  %v1555 = vpop.f32.mrb[0].mxu0
  %1556 = vdwg.mxu0
  %v1557 = vld [vmem:[#allocation2 + $0x2] sm:$0xff]
  %v1558 = vld [vmem:[#allocation2 + $0xa] sm:$0xff]
  %v1559 = vld [vmem:[#allocation2 + $0x1a] sm:$0xff]
  %v1560 = vld [vmem:[#allocation2 + $0x22] sm:$0xff]
  %v1561 = vld [vmem:[#allocation2 + $0x32] sm:$0xff]
  %v1562 = vld [vmem:[#allocation2 + $0x3a] sm:$0xff]
  %v1563 = vld [vmem:[#allocation2 + $0x4a] sm:$0xff]
  %v1564 = vld [vmem:[#allocation2 + $0x52] sm:$0xff]
  %v1565 = vld [vmem:[#allocation2 + $0x62] sm:$0xff]
  %v1566 = vld [vmem:[#allocation2 + $0x6a] sm:$0xff]
  %v1567 = vld [vmem:[#allocation2 + $0x7a] sm:$0xff]
  %v1568 = vld [vmem:[#allocation2 + $0x82] sm:$0xff]
  %v1569 = vld [vmem:[#allocation2 + $0x92] sm:$0xff]
  %v1570 = vld [vmem:[#allocation2 + $0x9a] sm:$0xff]
  %v1571 = vld [vmem:[#allocation2 + $0xaa] sm:$0xff]
  %v1572 = vld [vmem:[#allocation2 + $0xb2] sm:$0xff]
  %v1573 = vld [vmem:[#allocation2 + $0xc2] sm:$0xff]
  %v1574 = vld [vmem:[#allocation2 + $0xca] sm:$0xff]
  %v1575 = vld [vmem:[#allocation2 + $0xda] sm:$0xff]
  %v1576 = vld [vmem:[#allocation2 + $0xe2] sm:$0xff]
  %v1577 = vld [vmem:[#allocation2 + $0xf2] sm:$0xff]
  %v1578 = vld [vmem:[#allocation2 + $0xfa] sm:$0xff]
  %v1579 = vld [vmem:[#allocation2 + $0x10a] sm:$0xff]
  %v1580 = vld [vmem:[#allocation2 + $0x112] sm:$0xff]
  %v1581 = vld [vmem:[#allocation2 + $0x122] sm:$0xff]
  %v1582 = vld [vmem:[#allocation2 + $0x12a] sm:$0xff]
  %v1583 = vld [vmem:[#allocation2 + $0x13a] sm:$0xff]
  %v1584 = vld [vmem:[#allocation2 + $0x142] sm:$0xff]
  %v1585 = vld [vmem:[#allocation2 + $0x152] sm:$0xff]
  %v1586 = vld [vmem:[#allocation2 + $0x15a] sm:$0xff]
  %v1587 = vld [vmem:[#allocation2 + $0x16a] sm:$0xff]
  %v1588 = vld [vmem:[#allocation2 + $0x172] sm:$0xff]
  %v1589 = vld [vmem:[#allocation2 + $0x1b2] sm:$0xff]
  %v1590 = vld [vmem:[#allocation2 + $0x1ba] sm:$0xff]
  %v1591 = vld [vmem:[#allocation2 + $0x1ca] sm:$0xff]
  %v1592 = vld [vmem:[#allocation2 + $0x1d2] sm:$0xff]
  %v1593 = vld [vmem:[#allocation2 + $0x1e2] sm:$0xff]
  %v1594 = vld [vmem:[#allocation2 + $0x1ea] sm:$0xff]
  %v1595 = vld [vmem:[#allocation2 + $0x1fa] sm:$0xff]
  %v1596 = vld [vmem:[#allocation2 + $0x202] sm:$0xff]
  %v1597 = vld [vmem:[#allocation2 + $0x212] sm:$0xff]
  %v1598 = vld [vmem:[#allocation2 + $0x21a] sm:$0xff]
  %v1599 = vld [vmem:[#allocation2 + $0x22a] sm:$0xff]
  %v1600 = vld [vmem:[#allocation2 + $0x232] sm:$0xff]
  %v1601 = vld [vmem:[#allocation2 + $0x242] sm:$0xff]
  %v1602 = vld [vmem:[#allocation2 + $0x24a] sm:$0xff]
  %v1603 = vld [vmem:[#allocation2 + $0x25a] sm:$0xff]
  %v1604 = vld [vmem:[#allocation2 + $0x262] sm:$0xff]
  %v1605 = vld [vmem:[#allocation2 + $0x272] sm:$0xff]
  %v1606 = vld [vmem:[#allocation2 + $0x27a] sm:$0xff]
  %v1607 = vld [vmem:[#allocation2 + $0x28a] sm:$0xff]
  %v1608 = vld [vmem:[#allocation2 + $0x292] sm:$0xff]
  %v1609 = vld [vmem:[#allocation2 + $0x2a2] sm:$0xff]
  %v1610 = vld [vmem:[#allocation2 + $0x2aa] sm:$0xff]
  %v1611 = vld [vmem:[#allocation2 + $0x2ba] sm:$0xff]
  %v1612 = vld [vmem:[#allocation2 + $0x2c2] sm:$0xff]
  %v1613 = vld [vmem:[#allocation2 + $0x2d2] sm:$0xff]
  %v1614 = vld [vmem:[#allocation2 + $0x2da] sm:$0xff]
  %v1615 = vld [vmem:[#allocation2 + $0x2ea] sm:$0xff]
  %v1616 = vld [vmem:[#allocation2 + $0x2f2] sm:$0xff]
  %v1617 = vld [vmem:[#allocation2 + $0x302] sm:$0xff]
  %v1618 = vld [vmem:[#allocation2 + $0x30a] sm:$0xff]
  %v1619 = vld [vmem:[#allocation2 + $0x31a] sm:$0xff]
  %v1620 = vld [vmem:[#allocation2 + $0x322] sm:$0xff]
  %s1621 = scalar_lea.vmem %s1, 8
  %v1622 = vld [vmem:[%s1621] sm:$0xf]
  %v1624 = vsel %vm26, %v1557, 0
  %v1627 = vsel %vm26, %v1558, 0
  %v1630 = vsel %vm26, %v1559, 0
  %v1633 = vsel %vm26, %v1560, 0
  %v1636 = vsel %vm26, %v1561, 0
  %v1639 = vsel %vm26, %v1562, 0
  %v1642 = vsel %vm26, %v1563, 0
  %v1645 = vsel %vm26, %v1564, 0
  %v1648 = vsel %vm26, %v1565, 0
  %v1651 = vsel %vm26, %v1566, 0
  %v1654 = vsel %vm26, %v1567, 0
  %v1657 = vsel %vm26, %v1568, 0
  %v1660 = vsel %vm26, %v1569, 0
  %v1663 = vsel %vm26, %v1570, 0
  %v1666 = vsel %vm26, %v1571, 0
  %v1669 = vsel %vm26, %v1572, 0
  %v1672 = vsel %vm26, %v1573, 0
  %v1675 = vsel %vm26, %v1574, 0
  %v1678 = vsel %vm26, %v1575, 0
  %v1681 = vsel %vm26, %v1576, 0
  %v1684 = vsel %vm26, %v1577, 0
  %v1687 = vsel %vm26, %v1578, 0
  %v1690 = vsel %vm26, %v1579, 0
  %v1693 = vsel %vm26, %v1580, 0
  %v1696 = vsel %vm26, %v1581, 0
  %v1699 = vsel %vm26, %v1582, 0
  %v1702 = vsel %vm26, %v1583, 0
  %v1705 = vsel %vm26, %v1584, 0
  %v1708 = vsel %vm26, %v1585, 0
  %v1711 = vsel %vm26, %v1586, 0
  %v1714 = vsel %vm26, %v1587, 0
  %v1717 = vsel %vm26, %v1588, 0
  %v1720 = vsel %vm26, %v1589, 0
  %v1723 = vsel %vm26, %v1590, 0
  %v1726 = vsel %vm26, %v1591, 0
  %v1729 = vsel %vm26, %v1592, 0
  %v1732 = vsel %vm26, %v1593, 0
  %v1735 = vsel %vm26, %v1594, 0
  %v1738 = vsel %vm26, %v1595, 0
  %v1741 = vsel %vm26, %v1596, 0
  %v1744 = vsel %vm26, %v1597, 0
  %v1747 = vsel %vm26, %v1598, 0
  %v1750 = vsel %vm26, %v1599, 0
  %v1753 = vsel %vm26, %v1600, 0
  %v1756 = vsel %vm26, %v1601, 0
  %v1759 = vsel %vm26, %v1602, 0
  %v1762 = vsel %vm26, %v1603, 0
  %v1765 = vsel %vm26, %v1604, 0
  %v1768 = vsel %vm26, %v1605, 0
  %v1771 = vsel %vm26, %v1606, 0
  %v1774 = vsel %vm26, %v1607, 0
  %v1777 = vsel %vm26, %v1608, 0
  %v1780 = vsel %vm26, %v1609, 0
  %v1783 = vsel %vm26, %v1610, 0
  %v1786 = vsel %vm26, %v1611, 0
  %v1789 = vsel %vm26, %v1612, 0
  %v1792 = vsel %vm26, %v1613, 0
  %v1795 = vsel %vm26, %v1614, 0
  %v1798 = vsel %vm26, %v1615, 0
  %v1801 = vsel %vm26, %v1616, 0
  %v1804 = vsel %vm26, %v1617, 0
  %v1807 = vsel %vm26, %v1618, 0
  %v1810 = vsel %vm26, %v1619, 0
  %v1813 = vsel %vm26, %v1620, 0
  %v1816 = vsel %vm588, %v1622, 0
  %1818 = vmatprep.subr.mxu0 0.0
  %1819 = vmatpush1.msra.mxu0 %v1816
  %1820 = vmatprep.subr.mxu0 0.0
  %1821 = vmatpush1.msra.mxu0 0.0
  %1822 = vmatprep.subr.mxu0 0.0
  %1823 = vmatpush1.msra.mxu0 0.0
  %1824 = vmatprep.subr.mxu0 0.0
  %1825 = vmatpush1.msra.mxu0 0.0
  %1826 = vmatprep.subr.mxu0 0.0
  %1827 = vmatpush1.msra.mxu0 0.0
  %1828 = vmatprep.subr.mxu0 0.0
  %1829 = vmatpush1.msra.mxu0 0.0
  %1830 = vmatprep.subr.mxu0 0.0
  %1831 = vmatpush1.msra.mxu0 0.0
  %1832 = vmatprep.subr.mxu0 0.0
  %1833 = vmatpush1.msra.mxu0 0.0
  %1834 = vmatprep.subr.mxu0 0.0
  %1835 = vmatpush1.msra.mxu0 0.0
  %1836 = vmatprep.subr.mxu0 0.0
  %1837 = vmatpush1.msra.mxu0 0.0
  %1838 = vmatprep.subr.mxu0 0.0
  %1839 = vmatpush1.msra.mxu0 0.0
  %1840 = vmatprep.subr.mxu0 0.0
  %1841 = vmatpush1.msra.mxu0 0.0
  %1842 = vmatprep.subr.mxu0 0.0
  %1843 = vmatpush1.msra.mxu0 0.0
  %1844 = vmatprep.subr.mxu0 0.0
  %1845 = vmatpush1.msra.mxu0 0.0
  %1846 = vmatprep.subr.mxu0 0.0
  %1847 = vmatpush1.msra.mxu0 0.0
  %1848 = vmatprep.subr.mxu0 0.0
  %1849 = vmatpush1.msra.mxu0 0.0
  %1850 = vmatprep.subr.mxu0 0.0
  %1851 = vmatpush1.msra.mxu0 0.0
  %1852 = vmatprep.subr.mxu0 0.0
  %1853 = vmatpush1.msra.mxu0 0.0
  %1854 = vmatprep.subr.mxu0 0.0
  %1855 = vmatpush1.msra.mxu0 0.0
  %1856 = vmatprep.subr.mxu0 0.0
  %1857 = vmatpush1.msra.mxu0 0.0
  %1858 = vmatprep.subr.mxu0 0.0
  %1859 = vmatpush1.msra.mxu0 0.0
  %1860 = vmatprep.subr.mxu0 0.0
  %1861 = vmatpush1.msra.mxu0 0.0
  %1862 = vmatprep.subr.mxu0 0.0
  %1863 = vmatpush1.msra.mxu0 0.0
  %1864 = vmatprep.subr.mxu0 0.0
  %1865 = vmatpush1.msra.mxu0 0.0
  %1866 = vmatprep.subr.mxu0 0.0
  %1867 = vmatpush1.msra.mxu0 0.0
  %1868 = vmatprep.subr.mxu0 0.0
  %1869 = vmatpush1.msra.mxu0 0.0
  %1870 = vmatprep.subr.mxu0 0.0
  %1871 = vmatpush1.msra.mxu0 0.0
  %1872 = vmatprep.subr.mxu0 0.0
  %1873 = vmatpush1.msra.mxu0 0.0
  %1874 = vmatprep.subr.mxu0 0.0
  %1875 = vmatpush1.msra.mxu0 0.0
  %1876 = vmatprep.subr.mxu0 0.0
  %1877 = vmatpush1.msra.mxu0 0.0
  %1878 = vmatprep.subr.mxu0 0.0
  %1879 = vmatpush1.msra.mxu0 0.0
  %1880 = vmatprep.subr.mxu0 0.0
  %1881 = vmatpush1.msra.mxu0 0.0
  %1882 = vmatprep.mubr.f32.mxu0 0.0
  %1883 = vmatmul.mubr.f32.gmra.mrb[0].mxu0 %v1624
  %v1884 = vpop.f32.mrb[0].mxu0
  %v1885 = vadd.f32 0.0, %v1884
  %v1886 = vpop.f32.mrb[0].mxu0
  %1887 = vmatprep.mubr.f32.mxu0 0.0
  %1888 = vmatmul.mubr.f32.gmra.mrb[0].mxu0 %v1627
  %v1889 = vpop.f32.mrb[0].mxu0
  %v1890 = vadd.f32 0.0, %v1889
  %v1891 = vpop.f32.mrb[0].mxu0
  %1892 = vmatprep.mubr.f32.mxu0 0.0
  %1893 = vmatmul.mubr.f32.gmra.mrb[0].mxu0 %v1630
  %v1894 = vpop.f32.mrb[0].mxu0
  %v1895 = vadd.f32 0.0, %v1894
  %v1896 = vpop.f32.mrb[0].mxu0
  %1897 = vmatprep.mubr.f32.mxu0 0.0
  %1898 = vmatmul.mubr.f32.gmra.mrb[0].mxu0 %v1633
  %v1899 = vpop.f32.mrb[0].mxu0
  %v1900 = vadd.f32 0.0, %v1899
  %v1901 = vpop.f32.mrb[0].mxu0
  %1902 = vmatprep.mubr.f32.mxu0 0.0
  %1903 = vmatmul.mubr.f32.gmra.mrb[0].mxu0 %v1636
  %v1904 = vpop.f32.mrb[0].mxu0
  %v1905 = vadd.f32 0.0, %v1904
  %v1906 = vpop.f32.mrb[0].mxu0
  %1907 = vmatprep.mubr.f32.mxu0 0.0
  %1908 = vmatmul.mubr.f32.gmra.mrb[0].mxu0 %v1639
  %v1909 = vpop.f32.mrb[0].mxu0
  %v1910 = vadd.f32 0.0, %v1909
  %v1911 = vpop.f32.mrb[0].mxu0
  %1912 = vmatprep.mubr.f32.mxu0 0.0
  %1913 = vmatmul.mubr.f32.gmra.mrb[0].mxu0 %v1642
  %v1914 = vpop.f32.mrb[0].mxu0
  %v1915 = vadd.f32 0.0, %v1914
  %v1916 = vpop.f32.mrb[0].mxu0
  %1917 = vmatprep.mubr.f32.mxu0 0.0
  %1918 = vmatmul.mubr.f32.gmra.mrb[0].mxu0 %v1645
  %v1919 = vpop.f32.mrb[0].mxu0
  %v1920 = vadd.f32 0.0, %v1919
  %v1921 = vpop.f32.mrb[0].mxu0
  %1922 = vmatprep.mubr.f32.mxu0 0.0
  %1923 = vmatmul.mubr.f32.gmra.mrb[0].mxu0 %v1648
  %v1924 = vpop.f32.mrb[0].mxu0
  %v1925 = vadd.f32 0.0, %v1924
  %v1926 = vpop.f32.mrb[0].mxu0
  %1927 = vmatprep.mubr.f32.mxu0 0.0
  %1928 = vmatmul.mubr.f32.gmra.mrb[0].mxu0 %v1651
  %v1929 = vpop.f32.mrb[0].mxu0
  %v1930 = vadd.f32 0.0, %v1929
  %v1931 = vpop.f32.mrb[0].mxu0
  %1932 = vmatprep.mubr.f32.mxu0 0.0
  %1933 = vmatmul.mubr.f32.gmra.mrb[0].mxu0 %v1654
  %v1934 = vpop.f32.mrb[0].mxu0
  %v1935 = vadd.f32 0.0, %v1934
  %v1936 = vpop.f32.mrb[0].mxu0
  %1937 = vmatprep.mubr.f32.mxu0 0.0
  %1938 = vmatmul.mubr.f32.gmra.mrb[0].mxu0 %v1657
  %v1939 = vpop.f32.mrb[0].mxu0
  %v1940 = vadd.f32 0.0, %v1939
  %v1941 = vpop.f32.mrb[0].mxu0
  %1942 = vmatprep.mubr.f32.mxu0 0.0
  %1943 = vmatmul.mubr.f32.gmra.mrb[0].mxu0 %v1660
  %v1944 = vpop.f32.mrb[0].mxu0
  %v1945 = vadd.f32 0.0, %v1944
  %v1946 = vpop.f32.mrb[0].mxu0
  %1947 = vmatprep.mubr.f32.mxu0 0.0
  %1948 = vmatmul.mubr.f32.gmra.mrb[0].mxu0 %v1663
  %v1949 = vpop.f32.mrb[0].mxu0
  %v1950 = vadd.f32 0.0, %v1949
  %v1951 = vpop.f32.mrb[0].mxu0
  %1952 = vmatprep.mubr.f32.mxu0 0.0
  %1953 = vmatmul.mubr.f32.gmra.mrb[0].mxu0 %v1666
  %v1954 = vpop.f32.mrb[0].mxu0
  %v1955 = vadd.f32 0.0, %v1954
  %v1956 = vpop.f32.mrb[0].mxu0
  %1957 = vmatprep.mubr.f32.mxu0 0.0
  %1958 = vmatmul.mubr.f32.gmra.mrb[0].mxu0 %v1669
  %v1959 = vpop.f32.mrb[0].mxu0
  %v1960 = vadd.f32 0.0, %v1959
  %v1961 = vpop.f32.mrb[0].mxu0
  %1962 = vmatprep.mubr.f32.mxu0 0.0
  %1963 = vmatmul.mubr.f32.gmra.mrb[0].mxu0 %v1672
  %v1964 = vpop.f32.mrb[0].mxu0
  %v1965 = vadd.f32 0.0, %v1964
  %v1966 = vpop.f32.mrb[0].mxu0
  %1967 = vmatprep.mubr.f32.mxu0 0.0
  %1968 = vmatmul.mubr.f32.gmra.mrb[0].mxu0 %v1675
  %v1969 = vpop.f32.mrb[0].mxu0
  %v1970 = vadd.f32 0.0, %v1969
  %v1971 = vpop.f32.mrb[0].mxu0
  %1972 = vmatprep.mubr.f32.mxu0 0.0
  %1973 = vmatmul.mubr.f32.gmra.mrb[0].mxu0 %v1678
  %v1974 = vpop.f32.mrb[0].mxu0
  %v1975 = vadd.f32 0.0, %v1974
  %v1976 = vpop.f32.mrb[0].mxu0
  %1977 = vmatprep.mubr.f32.mxu0 0.0
  %1978 = vmatmul.mubr.f32.gmra.mrb[0].mxu0 %v1681
  %v1979 = vpop.f32.mrb[0].mxu0
  %v1980 = vadd.f32 0.0, %v1979
  %v1981 = vpop.f32.mrb[0].mxu0
  %1982 = vmatprep.mubr.f32.mxu0 0.0
  %1983 = vmatmul.mubr.f32.gmra.mrb[0].mxu0 %v1684
  %v1984 = vpop.f32.mrb[0].mxu0
  %v1985 = vadd.f32 0.0, %v1984
  %v1986 = vpop.f32.mrb[0].mxu0
  %1987 = vmatprep.mubr.f32.mxu0 0.0
  %1988 = vmatmul.mubr.f32.gmra.mrb[0].mxu0 %v1687
  %v1989 = vpop.f32.mrb[0].mxu0
  %v1990 = vadd.f32 0.0, %v1989
  %v1991 = vpop.f32.mrb[0].mxu0
  %1992 = vmatprep.mubr.f32.mxu0 0.0
  %1993 = vmatmul.mubr.f32.gmra.mrb[0].mxu0 %v1690
  %v1994 = vpop.f32.mrb[0].mxu0
  %v1995 = vadd.f32 0.0, %v1994
  %v1996 = vpop.f32.mrb[0].mxu0
  %1997 = vmatprep.mubr.f32.mxu0 0.0
  %1998 = vmatmul.mubr.f32.gmra.mrb[0].mxu0 %v1693
  %v1999 = vpop.f32.mrb[0].mxu0
  %v2000 = vadd.f32 0.0, %v1999
  %v2001 = vpop.f32.mrb[0].mxu0
  %2002 = vmatprep.mubr.f32.mxu0 0.0
  %2003 = vmatmul.mubr.f32.gmra.mrb[0].mxu0 %v1696
  %v2004 = vpop.f32.mrb[0].mxu0
  %v2005 = vadd.f32 0.0, %v2004
  %v2006 = vpop.f32.mrb[0].mxu0
  %2007 = vmatprep.mubr.f32.mxu0 0.0
  %2008 = vmatmul.mubr.f32.gmra.mrb[0].mxu0 %v1699
  %v2009 = vpop.f32.mrb[0].mxu0
  %v2010 = vadd.f32 0.0, %v2009
  %v2011 = vpop.f32.mrb[0].mxu0
  %2012 = vmatprep.mubr.f32.mxu0 0.0
  %2013 = vmatmul.mubr.f32.gmra.mrb[0].mxu0 %v1702
  %v2014 = vpop.f32.mrb[0].mxu0
  %v2015 = vadd.f32 0.0, %v2014
  %v2016 = vpop.f32.mrb[0].mxu0
  %2017 = vmatprep.mubr.f32.mxu0 0.0
  %2018 = vmatmul.mubr.f32.gmra.mrb[0].mxu0 %v1705
  %v2019 = vpop.f32.mrb[0].mxu0
  %v2020 = vadd.f32 0.0, %v2019
  %v2021 = vpop.f32.mrb[0].mxu0
  %2022 = vmatprep.mubr.f32.mxu0 0.0
  %2023 = vmatmul.mubr.f32.gmra.mrb[0].mxu0 %v1708
  %v2024 = vpop.f32.mrb[0].mxu0
  %v2025 = vadd.f32 0.0, %v2024
  %v2026 = vpop.f32.mrb[0].mxu0
  %2027 = vmatprep.mubr.f32.mxu0 0.0
  %2028 = vmatmul.mubr.f32.gmra.mrb[0].mxu0 %v1711
  %v2029 = vpop.f32.mrb[0].mxu0
  %v2030 = vadd.f32 0.0, %v2029
  %v2031 = vpop.f32.mrb[0].mxu0
  %2032 = vmatprep.mubr.f32.mxu0 0.0
  %2033 = vmatmul.mubr.f32.gmra.mrb[0].mxu0 %v1714
  %v2034 = vpop.f32.mrb[0].mxu0
  %v2035 = vadd.f32 0.0, %v2034
  %v2036 = vpop.f32.mrb[0].mxu0
  %2037 = vmatprep.mubr.f32.mxu0 0.0
  %2038 = vmatmul.mubr.f32.gmra.mrb[0].mxu0 %v1717
  %v2039 = vpop.f32.mrb[0].mxu0
  %v2040 = vadd.f32 0.0, %v2039
  %v2041 = vpop.f32.mrb[0].mxu0
  %2042 = vmatprep.mubr.f32.mxu0 0.0
  %2043 = vmatmul.mubr.f32.gmra.mrb[0].mxu0 %v1720
  %v2044 = vpop.f32.mrb[0].mxu0
  %v2045 = vadd.f32 0.0, %v2044
  %v2046 = vpop.f32.mrb[0].mxu0
  %2047 = vmatprep.mubr.f32.mxu0 0.0
  %2048 = vmatmul.mubr.f32.gmra.mrb[0].mxu0 %v1723
  %v2049 = vpop.f32.mrb[0].mxu0
  %v2050 = vadd.f32 0.0, %v2049
  %v2051 = vpop.f32.mrb[0].mxu0
  %2052 = vmatprep.mubr.f32.mxu0 0.0
  %2053 = vmatmul.mubr.f32.gmra.mrb[0].mxu0 %v1726
  %v2054 = vpop.f32.mrb[0].mxu0
  %v2055 = vadd.f32 0.0, %v2054
  %v2056 = vpop.f32.mrb[0].mxu0
  %2057 = vmatprep.mubr.f32.mxu0 0.0
  %2058 = vmatmul.mubr.f32.gmra.mrb[0].mxu0 %v1729
  %v2059 = vpop.f32.mrb[0].mxu0
  %v2060 = vadd.f32 0.0, %v2059
  %v2061 = vpop.f32.mrb[0].mxu0
  %2062 = vmatprep.mubr.f32.mxu0 0.0
  %2063 = vmatmul.mubr.f32.gmra.mrb[0].mxu0 %v1732
  %v2064 = vpop.f32.mrb[0].mxu0
  %v2065 = vadd.f32 0.0, %v2064
  %v2066 = vpop.f32.mrb[0].mxu0
  %2067 = vmatprep.mubr.f32.mxu0 0.0
  %2068 = vmatmul.mubr.f32.gmra.mrb[0].mxu0 %v1735
  %v2069 = vpop.f32.mrb[0].mxu0
  %v2070 = vadd.f32 0.0, %v2069
  %v2071 = vpop.f32.mrb[0].mxu0
  %2072 = vmatprep.mubr.f32.mxu0 0.0
  %2073 = vmatmul.mubr.f32.gmra.mrb[0].mxu0 %v1738
  %v2074 = vpop.f32.mrb[0].mxu0
  %v2075 = vadd.f32 0.0, %v2074
  %v2076 = vpop.f32.mrb[0].mxu0
  %2077 = vmatprep.mubr.f32.mxu0 0.0
  %2078 = vmatmul.mubr.f32.gmra.mrb[0].mxu0 %v1741
  %v2079 = vpop.f32.mrb[0].mxu0
  %v2080 = vadd.f32 0.0, %v2079
  %v2081 = vpop.f32.mrb[0].mxu0
  %2082 = vmatprep.mubr.f32.mxu0 0.0
  %2083 = vmatmul.mubr.f32.gmra.mrb[0].mxu0 %v1744
  %v2084 = vpop.f32.mrb[0].mxu0
  %v2085 = vadd.f32 0.0, %v2084
  %v2086 = vpop.f32.mrb[0].mxu0
  %2087 = vmatprep.mubr.f32.mxu0 0.0
  %2088 = vmatmul.mubr.f32.gmra.mrb[0].mxu0 %v1747
  %v2089 = vpop.f32.mrb[0].mxu0
  %v2090 = vadd.f32 0.0, %v2089
  %v2091 = vpop.f32.mrb[0].mxu0
  %2092 = vmatprep.mubr.f32.mxu0 0.0
  %2093 = vmatmul.mubr.f32.gmra.mrb[0].mxu0 %v1750
  %v2094 = vpop.f32.mrb[0].mxu0
  %v2095 = vadd.f32 0.0, %v2094
  %v2096 = vpop.f32.mrb[0].mxu0
  %2097 = vmatprep.mubr.f32.mxu0 0.0
  %2098 = vmatmul.mubr.f32.gmra.mrb[0].mxu0 %v1753
  %v2099 = vpop.f32.mrb[0].mxu0
  %v2100 = vadd.f32 0.0, %v2099
  %v2101 = vpop.f32.mrb[0].mxu0
  %2102 = vmatprep.mubr.f32.mxu0 0.0
  %2103 = vmatmul.mubr.f32.gmra.mrb[0].mxu0 %v1756
  %v2104 = vpop.f32.mrb[0].mxu0
  %v2105 = vadd.f32 0.0, %v2104
  %v2106 = vpop.f32.mrb[0].mxu0
  %2107 = vmatprep.mubr.f32.mxu0 0.0
  %2108 = vmatmul.mubr.f32.gmra.mrb[0].mxu0 %v1759
  %v2109 = vpop.f32.mrb[0].mxu0
  %v2110 = vadd.f32 0.0, %v2109
  %v2111 = vpop.f32.mrb[0].mxu0
  %2112 = vmatprep.mubr.f32.mxu0 0.0
  %2113 = vmatmul.mubr.f32.gmra.mrb[0].mxu0 %v1762
  %v2114 = vpop.f32.mrb[0].mxu0
  %v2115 = vadd.f32 0.0, %v2114
  %v2116 = vpop.f32.mrb[0].mxu0
  %2117 = vmatprep.mubr.f32.mxu0 0.0
  %2118 = vmatmul.mubr.f32.gmra.mrb[0].mxu0 %v1765
  %v2119 = vpop.f32.mrb[0].mxu0
  %v2120 = vadd.f32 0.0, %v2119
  %v2121 = vpop.f32.mrb[0].mxu0
  %2122 = vmatprep.mubr.f32.mxu0 0.0
  %2123 = vmatmul.mubr.f32.gmra.mrb[0].mxu0 %v1768
  %v2124 = vpop.f32.mrb[0].mxu0
  %v2125 = vadd.f32 0.0, %v2124
  %v2126 = vpop.f32.mrb[0].mxu0
  %2127 = vmatprep.mubr.f32.mxu0 0.0
  %2128 = vmatmul.mubr.f32.gmra.mrb[0].mxu0 %v1771
  %v2129 = vpop.f32.mrb[0].mxu0
  %v2130 = vadd.f32 0.0, %v2129
  %v2131 = vpop.f32.mrb[0].mxu0
  %2132 = vmatprep.mubr.f32.mxu0 0.0
  %2133 = vmatmul.mubr.f32.gmra.mrb[0].mxu0 %v1774
  %v2134 = vpop.f32.mrb[0].mxu0
  %v2135 = vadd.f32 0.0, %v2134
  %v2136 = vpop.f32.mrb[0].mxu0
  %2137 = vmatprep.mubr.f32.mxu0 0.0
  %2138 = vmatmul.mubr.f32.gmra.mrb[0].mxu0 %v1777
  %v2139 = vpop.f32.mrb[0].mxu0
  %v2140 = vadd.f32 0.0, %v2139
  %v2141 = vpop.f32.mrb[0].mxu0
  %2142 = vmatprep.mubr.f32.mxu0 0.0
  %2143 = vmatmul.mubr.f32.gmra.mrb[0].mxu0 %v1780
  %v2144 = vpop.f32.mrb[0].mxu0
  %v2145 = vadd.f32 0.0, %v2144
  %v2146 = vpop.f32.mrb[0].mxu0
  %2147 = vmatprep.mubr.f32.mxu0 0.0
  %2148 = vmatmul.mubr.f32.gmra.mrb[0].mxu0 %v1783
  %v2149 = vpop.f32.mrb[0].mxu0
  %v2150 = vadd.f32 0.0, %v2149
  %v2151 = vpop.f32.mrb[0].mxu0
  %2152 = vmatprep.mubr.f32.mxu0 0.0
  %2153 = vmatmul.mubr.f32.gmra.mrb[0].mxu0 %v1786
  %v2154 = vpop.f32.mrb[0].mxu0
  %v2155 = vadd.f32 0.0, %v2154
  %v2156 = vpop.f32.mrb[0].mxu0
  %2157 = vmatprep.mubr.f32.mxu0 0.0
  %2158 = vmatmul.mubr.f32.gmra.mrb[0].mxu0 %v1789
  %v2159 = vpop.f32.mrb[0].mxu0
  %v2160 = vadd.f32 0.0, %v2159
  %v2161 = vpop.f32.mrb[0].mxu0
  %2162 = vmatprep.mubr.f32.mxu0 0.0
  %2163 = vmatmul.mubr.f32.gmra.mrb[0].mxu0 %v1792
  %v2164 = vpop.f32.mrb[0].mxu0
  %v2165 = vadd.f32 0.0, %v2164
  %v2166 = vpop.f32.mrb[0].mxu0
  %2167 = vmatprep.mubr.f32.mxu0 0.0
  %2168 = vmatmul.mubr.f32.gmra.mrb[0].mxu0 %v1795
  %v2169 = vpop.f32.mrb[0].mxu0
  %v2170 = vadd.f32 0.0, %v2169
  %v2171 = vpop.f32.mrb[0].mxu0
  %2172 = vmatprep.mubr.f32.mxu0 0.0
  %2173 = vmatmul.mubr.f32.gmra.mrb[0].mxu0 %v1798
  %v2174 = vpop.f32.mrb[0].mxu0
  %v2175 = vadd.f32 0.0, %v2174
  %v2176 = vpop.f32.mrb[0].mxu0
  %2177 = vmatprep.mubr.f32.mxu0 0.0
  %2178 = vmatmul.mubr.f32.gmra.mrb[0].mxu0 %v1801
  %v2179 = vpop.f32.mrb[0].mxu0
  %v2180 = vadd.f32 0.0, %v2179
  %v2181 = vpop.f32.mrb[0].mxu0
  %2182 = vmatprep.mubr.f32.mxu0 0.0
  %2183 = vmatmul.mubr.f32.gmra.mrb[0].mxu0 %v1804
  %v2184 = vpop.f32.mrb[0].mxu0
  %v2185 = vadd.f32 0.0, %v2184
  %v2186 = vpop.f32.mrb[0].mxu0
  %2187 = vmatprep.mubr.f32.mxu0 0.0
  %2188 = vmatmul.mubr.f32.gmra.mrb[0].mxu0 %v1807
  %v2189 = vpop.f32.mrb[0].mxu0
  %v2190 = vadd.f32 0.0, %v2189
  %v2191 = vpop.f32.mrb[0].mxu0
  %2192 = vmatprep.mubr.f32.mxu0 0.0
  %2193 = vmatmul.mubr.f32.gmra.mrb[0].mxu0 %v1810
  %v2194 = vpop.f32.mrb[0].mxu0
  %v2195 = vadd.f32 0.0, %v2194
  %v2196 = vpop.f32.mrb[0].mxu0
  %2197 = vmatprep.mubr.f32.mxu0 0.0
  %2198 = vmatmul.mubr.f32.gmra.mrb[0].mxu0 %v1813
  %v2199 = vpop.f32.mrb[0].mxu0
  %v2200 = vadd.f32 0.0, %v2199
  %v2201 = vpop.f32.mrb[0].mxu0
  %2202 = vdwg.mxu0
  %v2203 = vadd.f32 %v1239, %v1885
  %v2204 = vadd.f32 %v1244, %v1890
  %v2205 = vadd.f32 %v1249, %v1895
  %v2206 = vadd.f32 %v1254, %v1900
  %v2207 = vadd.f32 %v1259, %v1905
  %v2208 = vadd.f32 %v1264, %v1910
  %v2209 = vadd.f32 %v1269, %v1915
  %v2210 = vadd.f32 %v1274, %v1920
  %v2211 = vadd.f32 %v1279, %v1925
  %v2212 = vadd.f32 %v1284, %v1930
  %v2213 = vadd.f32 %v1289, %v1935
  %v2214 = vadd.f32 %v1294, %v1940
  %v2215 = vadd.f32 %v1299, %v1945
  %v2216 = vadd.f32 %v1304, %v1950
  %v2217 = vadd.f32 %v1309, %v1955
  %v2218 = vadd.f32 %v1314, %v1960
  %v2219 = vadd.f32 %v1319, %v1965
  %v2220 = vadd.f32 %v1324, %v1970
  %v2221 = vadd.f32 %v1329, %v1975
  %v2222 = vadd.f32 %v1334, %v1980
  %v2223 = vadd.f32 %v1339, %v1985
  %v2224 = vadd.f32 %v1344, %v1990
  %v2225 = vadd.f32 %v1349, %v1995
  %v2226 = vadd.f32 %v1354, %v2000
  %v2227 = vadd.f32 %v1359, %v2005
  %v2228 = vadd.f32 %v1364, %v2010
  %v2229 = vadd.f32 %v1369, %v2015
  %v2230 = vadd.f32 %v1374, %v2020
  %v2231 = vadd.f32 %v1379, %v2025
  %v2232 = vadd.f32 %v1384, %v2030
  %v2233 = vadd.f32 %v1389, %v2035
  %v2234 = vadd.f32 %v1394, %v2040
  %v2235 = vadd.f32 %v1399, %v2045
  %v2236 = vadd.f32 %v1404, %v2050
  %v2237 = vadd.f32 %v1409, %v2055
  %v2238 = vadd.f32 %v1414, %v2060
  %v2239 = vadd.f32 %v1419, %v2065
  %v2240 = vadd.f32 %v1424, %v2070
  %v2241 = vadd.f32 %v1429, %v2075
  %v2242 = vadd.f32 %v1434, %v2080
  %v2243 = vadd.f32 %v1439, %v2085
  %v2244 = vadd.f32 %v1444, %v2090
  %v2245 = vadd.f32 %v1449, %v2095
  %v2246 = vadd.f32 %v1454, %v2100
  %v2247 = vadd.f32 %v1459, %v2105
  %v2248 = vadd.f32 %v1464, %v2110
  %v2249 = vadd.f32 %v1469, %v2115
  %v2250 = vadd.f32 %v1474, %v2120
  %v2251 = vadd.f32 %v1479, %v2125
  %v2252 = vadd.f32 %v1484, %v2130
  %v2253 = vadd.f32 %v1489, %v2135
  %v2254 = vadd.f32 %v1494, %v2140
  %v2255 = vadd.f32 %v1499, %v2145
  %v2256 = vadd.f32 %v1504, %v2150
  %v2257 = vadd.f32 %v1509, %v2155
  %v2258 = vadd.f32 %v1514, %v2160
  %v2259 = vadd.f32 %v1519, %v2165
  %v2260 = vadd.f32 %v1524, %v2170
  %v2261 = vadd.f32 %v1529, %v2175
  %v2262 = vadd.f32 %v1534, %v2180
  %v2263 = vadd.f32 %v1539, %v2185
  %v2264 = vadd.f32 %v1544, %v2190
  %v2265 = vadd.f32 %v1549, %v2195
  %v2266 = vadd.f32 %v1554, %v2200
  %v2267 = vld [vmem:[%s200] sm:$0xff]
  %v2268 = vld [vmem:[%s200 + $0x8] sm:$0xff]
  %v2269 = vld [vmem:[%s200 + $0x18] sm:$0xff]
  %v2270 = vld [vmem:[%s200 + $0x20] sm:$0xff]
  %v2271 = vld [vmem:[%s200 + $0x30] sm:$0xff]
  %v2272 = vld [vmem:[%s200 + $0x38] sm:$0xff]
  %v2273 = vld [vmem:[%s200 + $0x48] sm:$0xff]
  %v2274 = vld [vmem:[%s200 + $0x50] sm:$0xff]
  %v2275 = vld [vmem:[%s200 + $0x60] sm:$0xff]
  %v2276 = vld [vmem:[%s200 + $0x68] sm:$0xff]
  %v2277 = vld [vmem:[%s200 + $0x78] sm:$0xff]
  %v2278 = vld [vmem:[%s200 + $0x80] sm:$0xff]
  %v2279 = vld [vmem:[%s200 + $0x90] sm:$0xff]
  %v2280 = vld [vmem:[%s200 + $0x98] sm:$0xff]
  %v2281 = vld [vmem:[%s200 + $0xa8] sm:$0xff]
  %v2282 = vld [vmem:[%s200 + $0xb0] sm:$0xff]
  %v2283 = vld [vmem:[%s200 + $0xc0] sm:$0xff]
  %v2284 = vld [vmem:[%s200 + $0xc8] sm:$0xff]
  %v2285 = vld [vmem:[%s200 + $0xd8] sm:$0xff]
  %v2286 = vld [vmem:[%s200 + $0xe0] sm:$0xff]
  %v2287 = vld [vmem:[%s200 + $0xf0] sm:$0xff]
  %v2288 = vld [vmem:[%s200 + $0xf8] sm:$0xff]
  %v2289 = vld [vmem:[%s200 + $0x108] sm:$0xff]
  %v2290 = vld [vmem:[%s200 + $0x110] sm:$0xff]
  %v2291 = vld [vmem:[%s200 + $0x120] sm:$0xff]
  %v2292 = vld [vmem:[%s200 + $0x128] sm:$0xff]
  %v2293 = vld [vmem:[%s200 + $0x138] sm:$0xff]
  %v2294 = vld [vmem:[%s200 + $0x140] sm:$0xff]
  %v2295 = vld [vmem:[%s200 + $0x150] sm:$0xff]
  %v2296 = vld [vmem:[%s200 + $0x158] sm:$0xff]
  %v2297 = vld [vmem:[%s200 + $0x168] sm:$0xff]
  %v2298 = vld [vmem:[%s200 + $0x170] sm:$0xff]
  %v2299 = vld [vmem:[%s200 + $0x1b0] sm:$0xff]
  %v2300 = vld [vmem:[%s200 + $0x1b8] sm:$0xff]
  %v2301 = vld [vmem:[%s200 + $0x1c8] sm:$0xff]
  %v2302 = vld [vmem:[%s200 + $0x1d0] sm:$0xff]
  %v2303 = vld [vmem:[%s200 + $0x1e0] sm:$0xff]
  %v2304 = vld [vmem:[%s200 + $0x1e8] sm:$0xff]
  %v2305 = vld [vmem:[%s200 + $0x1f8] sm:$0xff]
  %v2306 = vld [vmem:[%s200 + $0x200] sm:$0xff]
  %v2307 = vld [vmem:[%s200 + $0x210] sm:$0xff]
  %v2308 = vld [vmem:[%s200 + $0x218] sm:$0xff]
  %v2309 = vld [vmem:[%s200 + $0x228] sm:$0xff]
  %v2310 = vld [vmem:[%s200 + $0x230] sm:$0xff]
  %v2311 = vld [vmem:[%s200 + $0x240] sm:$0xff]
  %v2312 = vld [vmem:[%s200 + $0x248] sm:$0xff]
  %v2313 = vld [vmem:[%s200 + $0x258] sm:$0xff]
  %v2314 = vld [vmem:[%s200 + $0x260] sm:$0xff]
  %v2315 = vld [vmem:[%s200 + $0x270] sm:$0xff]
  %v2316 = vld [vmem:[%s200 + $0x278] sm:$0xff]
  %v2317 = vld [vmem:[%s200 + $0x288] sm:$0xff]
  %v2318 = vld [vmem:[%s200 + $0x290] sm:$0xff]
  %v2319 = vld [vmem:[%s200 + $0x2a0] sm:$0xff]
  %v2320 = vld [vmem:[%s200 + $0x2a8] sm:$0xff]
  %v2321 = vld [vmem:[%s200 + $0x2b8] sm:$0xff]
  %v2322 = vld [vmem:[%s200 + $0x2c0] sm:$0xff]
  %v2323 = vld [vmem:[%s200 + $0x2d0] sm:$0xff]
  %v2324 = vld [vmem:[%s200 + $0x2d8] sm:$0xff]
  %v2325 = vld [vmem:[%s200 + $0x2e8] sm:$0xff]
  %v2326 = vld [vmem:[%s200 + $0x2f0] sm:$0xff]
  %v2327 = vld [vmem:[%s200 + $0x300] sm:$0xff]
  %v2328 = vld [vmem:[%s200 + $0x308] sm:$0xff]
  %v2329 = vld [vmem:[%s200 + $0x318] sm:$0xff]
  %v2330 = vld [vmem:[%s200 + $0x320] sm:$0xff]
  %s2331 = scalar_lea.vmem %s1, 12
  %v2332 = vld [vmem:[%s2331] sm:$0xf]
  %v2334 = vsel %vm26, %v2267, 0
  %v2337 = vsel %vm26, %v2268, 0
  %v2340 = vsel %vm26, %v2269, 0
  %v2343 = vsel %vm26, %v2270, 0
  %v2346 = vsel %vm26, %v2271, 0
  %v2349 = vsel %vm26, %v2272, 0
  %v2352 = vsel %vm26, %v2273, 0
  %v2355 = vsel %vm26, %v2274, 0
  %v2358 = vsel %vm26, %v2275, 0
  %v2361 = vsel %vm26, %v2276, 0
  %v2364 = vsel %vm26, %v2277, 0
  %v2367 = vsel %vm26, %v2278, 0
  %v2370 = vsel %vm26, %v2279, 0
  %v2373 = vsel %vm26, %v2280, 0
  %v2376 = vsel %vm26, %v2281, 0
  %v2379 = vsel %vm26, %v2282, 0
  %v2382 = vsel %vm26, %v2283, 0
  %v2385 = vsel %vm26, %v2284, 0
  %v2388 = vsel %vm26, %v2285, 0
  %v2391 = vsel %vm26, %v2286, 0
  %v2394 = vsel %vm26, %v2287, 0
  %v2397 = vsel %vm26, %v2288, 0
  %v2400 = vsel %vm26, %v2289, 0
  %v2403 = vsel %vm26, %v2290, 0
  %v2406 = vsel %vm26, %v2291, 0
  %v2409 = vsel %vm26, %v2292, 0
  %v2412 = vsel %vm26, %v2293, 0
  %v2415 = vsel %vm26, %v2294, 0
  %v2418 = vsel %vm26, %v2295, 0
  %v2421 = vsel %vm26, %v2296, 0
  %v2424 = vsel %vm26, %v2297, 0
  %v2427 = vsel %vm26, %v2298, 0
  %v2430 = vsel %vm26, %v2299, 0
  %v2433 = vsel %vm26, %v2300, 0
  %v2436 = vsel %vm26, %v2301, 0
  %v2439 = vsel %vm26, %v2302, 0
  %v2442 = vsel %vm26, %v2303, 0
  %v2445 = vsel %vm26, %v2304, 0
  %v2448 = vsel %vm26, %v2305, 0
  %v2451 = vsel %vm26, %v2306, 0
  %v2454 = vsel %vm26, %v2307, 0
  %v2457 = vsel %vm26, %v2308, 0
  %v2460 = vsel %vm26, %v2309, 0
  %v2463 = vsel %vm26, %v2310, 0
  %v2466 = vsel %vm26, %v2311, 0
  %v2469 = vsel %vm26, %v2312, 0
  %v2472 = vsel %vm26, %v2313, 0
  %v2475 = vsel %vm26, %v2314, 0
  %v2478 = vsel %vm26, %v2315, 0
  %v2481 = vsel %vm26, %v2316, 0
  %v2484 = vsel %vm26, %v2317, 0
  %v2487 = vsel %vm26, %v2318, 0
  %v2490 = vsel %vm26, %v2319, 0
  %v2493 = vsel %vm26, %v2320, 0
  %v2496 = vsel %vm26, %v2321, 0
  %v2499 = vsel %vm26, %v2322, 0
  %v2502 = vsel %vm26, %v2323, 0
  %v2505 = vsel %vm26, %v2324, 0
  %v2508 = vsel %vm26, %v2325, 0
  %v2511 = vsel %vm26, %v2326, 0
  %v2514 = vsel %vm26, %v2327, 0
  %v2517 = vsel %vm26, %v2328, 0
  %v2520 = vsel %vm26, %v2329, 0
  %v2523 = vsel %vm26, %v2330, 0
  %v2526 = vsel %vm588, %v2332, 0
  %2528 = vmatprep.subr.mxu0 0.0
  %2529 = vmatpush1.msra.mxu0 %v2526
  %2530 = vmatprep.subr.mxu0 0.0
  %2531 = vmatpush1.msra.mxu0 0.0
  %2532 = vmatprep.subr.mxu0 0.0
  %2533 = vmatpush1.msra.mxu0 0.0
  %2534 = vmatprep.subr.mxu0 0.0
  %2535 = vmatpush1.msra.mxu0 0.0
  %2536 = vmatprep.subr.mxu0 0.0
  %2537 = vmatpush1.msra.mxu0 0.0
  %2538 = vmatprep.subr.mxu0 0.0
  %2539 = vmatpush1.msra.mxu0 0.0
  %2540 = vmatprep.subr.mxu0 0.0
  %2541 = vmatpush1.msra.mxu0 0.0
  %2542 = vmatprep.subr.mxu0 0.0
  %2543 = vmatpush1.msra.mxu0 0.0
  %2544 = vmatprep.subr.mxu0 0.0
  %2545 = vmatpush1.msra.mxu0 0.0
  %2546 = vmatprep.subr.mxu0 0.0
  %2547 = vmatpush1.msra.mxu0 0.0
  %2548 = vmatprep.subr.mxu0 0.0
  %2549 = vmatpush1.msra.mxu0 0.0
  %2550 = vmatprep.subr.mxu0 0.0
  %2551 = vmatpush1.msra.mxu0 0.0
  %2552 = vmatprep.subr.mxu0 0.0
  %2553 = vmatpush1.msra.mxu0 0.0
  %2554 = vmatprep.subr.mxu0 0.0
  %2555 = vmatpush1.msra.mxu0 0.0
  %2556 = vmatprep.subr.mxu0 0.0
  %2557 = vmatpush1.msra.mxu0 0.0
  %2558 = vmatprep.subr.mxu0 0.0
  %2559 = vmatpush1.msra.mxu0 0.0
  %2560 = vmatprep.subr.mxu0 0.0
  %2561 = vmatpush1.msra.mxu0 0.0
  %2562 = vmatprep.subr.mxu0 0.0
  %2563 = vmatpush1.msra.mxu0 0.0
  %2564 = vmatprep.subr.mxu0 0.0
  %2565 = vmatpush1.msra.mxu0 0.0
  %2566 = vmatprep.subr.mxu0 0.0
  %2567 = vmatpush1.msra.mxu0 0.0
  %2568 = vmatprep.subr.mxu0 0.0
  %2569 = vmatpush1.msra.mxu0 0.0
  %2570 = vmatprep.subr.mxu0 0.0
  %2571 = vmatpush1.msra.mxu0 0.0
  %2572 = vmatprep.subr.mxu0 0.0
  %2573 = vmatpush1.msra.mxu0 0.0
  %2574 = vmatprep.subr.mxu0 0.0
  %2575 = vmatpush1.msra.mxu0 0.0
  %2576 = vmatprep.subr.mxu0 0.0
  %2577 = vmatpush1.msra.mxu0 0.0
  %2578 = vmatprep.subr.mxu0 0.0
  %2579 = vmatpush1.msra.mxu0 0.0
  %2580 = vmatprep.subr.mxu0 0.0
  %2581 = vmatpush1.msra.mxu0 0.0
  %2582 = vmatprep.subr.mxu0 0.0
  %2583 = vmatpush1.msra.mxu0 0.0
  %2584 = vmatprep.subr.mxu0 0.0
  %2585 = vmatpush1.msra.mxu0 0.0
  %2586 = vmatprep.subr.mxu0 0.0
  %2587 = vmatpush1.msra.mxu0 0.0
  %2588 = vmatprep.subr.mxu0 0.0
  %2589 = vmatpush1.msra.mxu0 0.0
  %2590 = vmatprep.subr.mxu0 0.0
  %2591 = vmatpush1.msra.mxu0 0.0
  %2592 = vmatprep.mubr.f32.mxu0 0.0
  %2593 = vmatmul.mubr.f32.gmra.mrb[0].mxu0 %v2334
  %v2594 = vpop.f32.mrb[0].mxu0
  %v2595 = vadd.f32 0.0, %v2594
  %v2596 = vpop.f32.mrb[0].mxu0
  %2597 = vmatprep.mubr.f32.mxu0 0.0
  %2598 = vmatmul.mubr.f32.gmra.mrb[0].mxu0 %v2337
  %v2599 = vpop.f32.mrb[0].mxu0
  %v2600 = vadd.f32 0.0, %v2599
  %v2601 = vpop.f32.mrb[0].mxu0
  %2602 = vmatprep.mubr.f32.mxu0 0.0
  %2603 = vmatmul.mubr.f32.gmra.mrb[0].mxu0 %v2340
  %v2604 = vpop.f32.mrb[0].mxu0
  %v2605 = vadd.f32 0.0, %v2604
  %v2606 = vpop.f32.mrb[0].mxu0
  %2607 = vmatprep.mubr.f32.mxu0 0.0
  %2608 = vmatmul.mubr.f32.gmra.mrb[0].mxu0 %v2343
  %v2609 = vpop.f32.mrb[0].mxu0
  %v2610 = vadd.f32 0.0, %v2609
  %v2611 = vpop.f32.mrb[0].mxu0
  %2612 = vmatprep.mubr.f32.mxu0 0.0
  %2613 = vmatmul.mubr.f32.gmra.mrb[0].mxu0 %v2346
  %v2614 = vpop.f32.mrb[0].mxu0
  %v2615 = vadd.f32 0.0, %v2614
  %v2616 = vpop.f32.mrb[0].mxu0
  %2617 = vmatprep.mubr.f32.mxu0 0.0
  %2618 = vmatmul.mubr.f32.gmra.mrb[0].mxu0 %v2349
  %v2619 = vpop.f32.mrb[0].mxu0
  %v2620 = vadd.f32 0.0, %v2619
  %v2621 = vpop.f32.mrb[0].mxu0
  %2622 = vmatprep.mubr.f32.mxu0 0.0
  %2623 = vmatmul.mubr.f32.gmra.mrb[0].mxu0 %v2352
  %v2624 = vpop.f32.mrb[0].mxu0
  %v2625 = vadd.f32 0.0, %v2624
  %v2626 = vpop.f32.mrb[0].mxu0
  %2627 = vmatprep.mubr.f32.mxu0 0.0
  %2628 = vmatmul.mubr.f32.gmra.mrb[0].mxu0 %v2355
  %v2629 = vpop.f32.mrb[0].mxu0
  %v2630 = vadd.f32 0.0, %v2629
  %v2631 = vpop.f32.mrb[0].mxu0
  %2632 = vmatprep.mubr.f32.mxu0 0.0
  %2633 = vmatmul.mubr.f32.gmra.mrb[0].mxu0 %v2358
  %v2634 = vpop.f32.mrb[0].mxu0
  %v2635 = vadd.f32 0.0, %v2634
  %v2636 = vpop.f32.mrb[0].mxu0
  %2637 = vmatprep.mubr.f32.mxu0 0.0
  %2638 = vmatmul.mubr.f32.gmra.mrb[0].mxu0 %v2361
  %v2639 = vpop.f32.mrb[0].mxu0
  %v2640 = vadd.f32 0.0, %v2639
  %v2641 = vpop.f32.mrb[0].mxu0
  %2642 = vmatprep.mubr.f32.mxu0 0.0
  %2643 = vmatmul.mubr.f32.gmra.mrb[0].mxu0 %v2364
  %v2644 = vpop.f32.mrb[0].mxu0
  %v2645 = vadd.f32 0.0, %v2644
  %v2646 = vpop.f32.mrb[0].mxu0
  %2647 = vmatprep.mubr.f32.mxu0 0.0
  %2648 = vmatmul.mubr.f32.gmra.mrb[0].mxu0 %v2367
  %v2649 = vpop.f32.mrb[0].mxu0
  %v2650 = vadd.f32 0.0, %v2649
  %v2651 = vpop.f32.mrb[0].mxu0
  %2652 = vmatprep.mubr.f32.mxu0 0.0
  %2653 = vmatmul.mubr.f32.gmra.mrb[0].mxu0 %v2370
  %v2654 = vpop.f32.mrb[0].mxu0
  %v2655 = vadd.f32 0.0, %v2654
  %v2656 = vpop.f32.mrb[0].mxu0
  %2657 = vmatprep.mubr.f32.mxu0 0.0
  %2658 = vmatmul.mubr.f32.gmra.mrb[0].mxu0 %v2373
  %v2659 = vpop.f32.mrb[0].mxu0
  %v2660 = vadd.f32 0.0, %v2659
  %v2661 = vpop.f32.mrb[0].mxu0
  %2662 = vmatprep.mubr.f32.mxu0 0.0
  %2663 = vmatmul.mubr.f32.gmra.mrb[0].mxu0 %v2376
  %v2664 = vpop.f32.mrb[0].mxu0
  %v2665 = vadd.f32 0.0, %v2664
  %v2666 = vpop.f32.mrb[0].mxu0
  %2667 = vmatprep.mubr.f32.mxu0 0.0
  %2668 = vmatmul.mubr.f32.gmra.mrb[0].mxu0 %v2379
  %v2669 = vpop.f32.mrb[0].mxu0
  %v2670 = vadd.f32 0.0, %v2669
  %v2671 = vpop.f32.mrb[0].mxu0
  %2672 = vmatprep.mubr.f32.mxu0 0.0
  %2673 = vmatmul.mubr.f32.gmra.mrb[0].mxu0 %v2382
  %v2674 = vpop.f32.mrb[0].mxu0
  %v2675 = vadd.f32 0.0, %v2674
  %v2676 = vpop.f32.mrb[0].mxu0
  %2677 = vmatprep.mubr.f32.mxu0 0.0
  %2678 = vmatmul.mubr.f32.gmra.mrb[0].mxu0 %v2385
  %v2679 = vpop.f32.mrb[0].mxu0
  %v2680 = vadd.f32 0.0, %v2679
  %v2681 = vpop.f32.mrb[0].mxu0
  %2682 = vmatprep.mubr.f32.mxu0 0.0
  %2683 = vmatmul.mubr.f32.gmra.mrb[0].mxu0 %v2388
  %v2684 = vpop.f32.mrb[0].mxu0
  %v2685 = vadd.f32 0.0, %v2684
  %v2686 = vpop.f32.mrb[0].mxu0
  %2687 = vmatprep.mubr.f32.mxu0 0.0
  %2688 = vmatmul.mubr.f32.gmra.mrb[0].mxu0 %v2391
  %v2689 = vpop.f32.mrb[0].mxu0
  %v2690 = vadd.f32 0.0, %v2689
  %v2691 = vpop.f32.mrb[0].mxu0
  %2692 = vmatprep.mubr.f32.mxu0 0.0
  %2693 = vmatmul.mubr.f32.gmra.mrb[0].mxu0 %v2394
  %v2694 = vpop.f32.mrb[0].mxu0
  %v2695 = vadd.f32 0.0, %v2694
  %v2696 = vpop.f32.mrb[0].mxu0
  %2697 = vmatprep.mubr.f32.mxu0 0.0
  %2698 = vmatmul.mubr.f32.gmra.mrb[0].mxu0 %v2397
  %v2699 = vpop.f32.mrb[0].mxu0
  %v2700 = vadd.f32 0.0, %v2699
  %v2701 = vpop.f32.mrb[0].mxu0
  %2702 = vmatprep.mubr.f32.mxu0 0.0
  %2703 = vmatmul.mubr.f32.gmra.mrb[0].mxu0 %v2400
  %v2704 = vpop.f32.mrb[0].mxu0
  %v2705 = vadd.f32 0.0, %v2704
  %v2706 = vpop.f32.mrb[0].mxu0
  %2707 = vmatprep.mubr.f32.mxu0 0.0
  %2708 = vmatmul.mubr.f32.gmra.mrb[0].mxu0 %v2403
  %v2709 = vpop.f32.mrb[0].mxu0
  %v2710 = vadd.f32 0.0, %v2709
  %v2711 = vpop.f32.mrb[0].mxu0
  %2712 = vmatprep.mubr.f32.mxu0 0.0
  %2713 = vmatmul.mubr.f32.gmra.mrb[0].mxu0 %v2406
  %v2714 = vpop.f32.mrb[0].mxu0
  %v2715 = vadd.f32 0.0, %v2714
  %v2716 = vpop.f32.mrb[0].mxu0
  %2717 = vmatprep.mubr.f32.mxu0 0.0
  %2718 = vmatmul.mubr.f32.gmra.mrb[0].mxu0 %v2409
  %v2719 = vpop.f32.mrb[0].mxu0
  %v2720 = vadd.f32 0.0, %v2719
  %v2721 = vpop.f32.mrb[0].mxu0
  %2722 = vmatprep.mubr.f32.mxu0 0.0
  %2723 = vmatmul.mubr.f32.gmra.mrb[0].mxu0 %v2412
  %v2724 = vpop.f32.mrb[0].mxu0
  %v2725 = vadd.f32 0.0, %v2724
  %v2726 = vpop.f32.mrb[0].mxu0
  %2727 = vmatprep.mubr.f32.mxu0 0.0
  %2728 = vmatmul.mubr.f32.gmra.mrb[0].mxu0 %v2415
  %v2729 = vpop.f32.mrb[0].mxu0
  %v2730 = vadd.f32 0.0, %v2729
  %v2731 = vpop.f32.mrb[0].mxu0
  %2732 = vmatprep.mubr.f32.mxu0 0.0
  %2733 = vmatmul.mubr.f32.gmra.mrb[0].mxu0 %v2418
  %v2734 = vpop.f32.mrb[0].mxu0
  %v2735 = vadd.f32 0.0, %v2734
  %v2736 = vpop.f32.mrb[0].mxu0
  %2737 = vmatprep.mubr.f32.mxu0 0.0
  %2738 = vmatmul.mubr.f32.gmra.mrb[0].mxu0 %v2421
  %v2739 = vpop.f32.mrb[0].mxu0
  %v2740 = vadd.f32 0.0, %v2739
  %v2741 = vpop.f32.mrb[0].mxu0
  %2742 = vmatprep.mubr.f32.mxu0 0.0
  %2743 = vmatmul.mubr.f32.gmra.mrb[0].mxu0 %v2424
  %v2744 = vpop.f32.mrb[0].mxu0
  %v2745 = vadd.f32 0.0, %v2744
  %v2746 = vpop.f32.mrb[0].mxu0
  %2747 = vmatprep.mubr.f32.mxu0 0.0
  %2748 = vmatmul.mubr.f32.gmra.mrb[0].mxu0 %v2427
  %v2749 = vpop.f32.mrb[0].mxu0
  %v2750 = vadd.f32 0.0, %v2749
  %v2751 = vpop.f32.mrb[0].mxu0
  %2752 = vmatprep.mubr.f32.mxu0 0.0
  %2753 = vmatmul.mubr.f32.gmra.mrb[0].mxu0 %v2430
  %v2754 = vpop.f32.mrb[0].mxu0
  %v2755 = vadd.f32 0.0, %v2754
  %v2756 = vpop.f32.mrb[0].mxu0
  %2757 = vmatprep.mubr.f32.mxu0 0.0
  %2758 = vmatmul.mubr.f32.gmra.mrb[0].mxu0 %v2433
  %v2759 = vpop.f32.mrb[0].mxu0
  %v2760 = vadd.f32 0.0, %v2759
  %v2761 = vpop.f32.mrb[0].mxu0
  %2762 = vmatprep.mubr.f32.mxu0 0.0
  %2763 = vmatmul.mubr.f32.gmra.mrb[0].mxu0 %v2436
  %v2764 = vpop.f32.mrb[0].mxu0
  %v2765 = vadd.f32 0.0, %v2764
  %v2766 = vpop.f32.mrb[0].mxu0
  %2767 = vmatprep.mubr.f32.mxu0 0.0
  %2768 = vmatmul.mubr.f32.gmra.mrb[0].mxu0 %v2439
  %v2769 = vpop.f32.mrb[0].mxu0
  %v2770 = vadd.f32 0.0, %v2769
  %v2771 = vpop.f32.mrb[0].mxu0
  %2772 = vmatprep.mubr.f32.mxu0 0.0
  %2773 = vmatmul.mubr.f32.gmra.mrb[0].mxu0 %v2442
  %v2774 = vpop.f32.mrb[0].mxu0
  %v2775 = vadd.f32 0.0, %v2774
  %v2776 = vpop.f32.mrb[0].mxu0
  %2777 = vmatprep.mubr.f32.mxu0 0.0
  %2778 = vmatmul.mubr.f32.gmra.mrb[0].mxu0 %v2445
  %v2779 = vpop.f32.mrb[0].mxu0
  %v2780 = vadd.f32 0.0, %v2779
  %v2781 = vpop.f32.mrb[0].mxu0
  %2782 = vmatprep.mubr.f32.mxu0 0.0
  %2783 = vmatmul.mubr.f32.gmra.mrb[0].mxu0 %v2448
  %v2784 = vpop.f32.mrb[0].mxu0
  %v2785 = vadd.f32 0.0, %v2784
  %v2786 = vpop.f32.mrb[0].mxu0
  %2787 = vmatprep.mubr.f32.mxu0 0.0
  %2788 = vmatmul.mubr.f32.gmra.mrb[0].mxu0 %v2451
  %v2789 = vpop.f32.mrb[0].mxu0
  %v2790 = vadd.f32 0.0, %v2789
  %v2791 = vpop.f32.mrb[0].mxu0
  %2792 = vmatprep.mubr.f32.mxu0 0.0
  %2793 = vmatmul.mubr.f32.gmra.mrb[0].mxu0 %v2454
  %v2794 = vpop.f32.mrb[0].mxu0
  %v2795 = vadd.f32 0.0, %v2794
  %v2796 = vpop.f32.mrb[0].mxu0
  %2797 = vmatprep.mubr.f32.mxu0 0.0
  %2798 = vmatmul.mubr.f32.gmra.mrb[0].mxu0 %v2457
  %v2799 = vpop.f32.mrb[0].mxu0
  %v2800 = vadd.f32 0.0, %v2799
  %v2801 = vpop.f32.mrb[0].mxu0
  %2802 = vmatprep.mubr.f32.mxu0 0.0
  %2803 = vmatmul.mubr.f32.gmra.mrb[0].mxu0 %v2460
  %v2804 = vpop.f32.mrb[0].mxu0
  %v2805 = vadd.f32 0.0, %v2804
  %v2806 = vpop.f32.mrb[0].mxu0
  %2807 = vmatprep.mubr.f32.mxu0 0.0
  %2808 = vmatmul.mubr.f32.gmra.mrb[0].mxu0 %v2463
  %v2809 = vpop.f32.mrb[0].mxu0
  %v2810 = vadd.f32 0.0, %v2809
  %v2811 = vpop.f32.mrb[0].mxu0
  %2812 = vmatprep.mubr.f32.mxu0 0.0
  %2813 = vmatmul.mubr.f32.gmra.mrb[0].mxu0 %v2466
  %v2814 = vpop.f32.mrb[0].mxu0
  %v2815 = vadd.f32 0.0, %v2814
  %v2816 = vpop.f32.mrb[0].mxu0
  %2817 = vmatprep.mubr.f32.mxu0 0.0
  %2818 = vmatmul.mubr.f32.gmra.mrb[0].mxu0 %v2469
  %v2819 = vpop.f32.mrb[0].mxu0
  %v2820 = vadd.f32 0.0, %v2819
  %v2821 = vpop.f32.mrb[0].mxu0
  %2822 = vmatprep.mubr.f32.mxu0 0.0
  %2823 = vmatmul.mubr.f32.gmra.mrb[0].mxu0 %v2472
  %v2824 = vpop.f32.mrb[0].mxu0
  %v2825 = vadd.f32 0.0, %v2824
  %v2826 = vpop.f32.mrb[0].mxu0
  %2827 = vmatprep.mubr.f32.mxu0 0.0
  %2828 = vmatmul.mubr.f32.gmra.mrb[0].mxu0 %v2475
  %v2829 = vpop.f32.mrb[0].mxu0
  %v2830 = vadd.f32 0.0, %v2829
  %v2831 = vpop.f32.mrb[0].mxu0
  %2832 = vmatprep.mubr.f32.mxu0 0.0
  %2833 = vmatmul.mubr.f32.gmra.mrb[0].mxu0 %v2478
  %v2834 = vpop.f32.mrb[0].mxu0
  %v2835 = vadd.f32 0.0, %v2834
  %v2836 = vpop.f32.mrb[0].mxu0
  %2837 = vmatprep.mubr.f32.mxu0 0.0
  %2838 = vmatmul.mubr.f32.gmra.mrb[0].mxu0 %v2481
  %v2839 = vpop.f32.mrb[0].mxu0
  %v2840 = vadd.f32 0.0, %v2839
  %v2841 = vpop.f32.mrb[0].mxu0
  %2842 = vmatprep.mubr.f32.mxu0 0.0
  %2843 = vmatmul.mubr.f32.gmra.mrb[0].mxu0 %v2484
  %v2844 = vpop.f32.mrb[0].mxu0
  %v2845 = vadd.f32 0.0, %v2844
  %v2846 = vpop.f32.mrb[0].mxu0
  %2847 = vmatprep.mubr.f32.mxu0 0.0
  %2848 = vmatmul.mubr.f32.gmra.mrb[0].mxu0 %v2487
  %v2849 = vpop.f32.mrb[0].mxu0
  %v2850 = vadd.f32 0.0, %v2849
  %v2851 = vpop.f32.mrb[0].mxu0
  %2852 = vmatprep.mubr.f32.mxu0 0.0
  %2853 = vmatmul.mubr.f32.gmra.mrb[0].mxu0 %v2490
  %v2854 = vpop.f32.mrb[0].mxu0
  %v2855 = vadd.f32 0.0, %v2854
  %v2856 = vpop.f32.mrb[0].mxu0
  %2857 = vmatprep.mubr.f32.mxu0 0.0
  %2858 = vmatmul.mubr.f32.gmra.mrb[0].mxu0 %v2493
  %v2859 = vpop.f32.mrb[0].mxu0
  %v2860 = vadd.f32 0.0, %v2859
  %v2861 = vpop.f32.mrb[0].mxu0
  %2862 = vmatprep.mubr.f32.mxu0 0.0
  %2863 = vmatmul.mubr.f32.gmra.mrb[0].mxu0 %v2496
  %v2864 = vpop.f32.mrb[0].mxu0
  %v2865 = vadd.f32 0.0, %v2864
  %v2866 = vpop.f32.mrb[0].mxu0
  %2867 = vmatprep.mubr.f32.mxu0 0.0
  %2868 = vmatmul.mubr.f32.gmra.mrb[0].mxu0 %v2499
  %v2869 = vpop.f32.mrb[0].mxu0
  %v2870 = vadd.f32 0.0, %v2869
  %v2871 = vpop.f32.mrb[0].mxu0
  %2872 = vmatprep.mubr.f32.mxu0 0.0
  %2873 = vmatmul.mubr.f32.gmra.mrb[0].mxu0 %v2502
  %v2874 = vpop.f32.mrb[0].mxu0
  %v2875 = vadd.f32 0.0, %v2874
  %v2876 = vpop.f32.mrb[0].mxu0
  %2877 = vmatprep.mubr.f32.mxu0 0.0
  %2878 = vmatmul.mubr.f32.gmra.mrb[0].mxu0 %v2505
  %v2879 = vpop.f32.mrb[0].mxu0
  %v2880 = vadd.f32 0.0, %v2879
  %v2881 = vpop.f32.mrb[0].mxu0
  %2882 = vmatprep.mubr.f32.mxu0 0.0
  %2883 = vmatmul.mubr.f32.gmra.mrb[0].mxu0 %v2508
  %v2884 = vpop.f32.mrb[0].mxu0
  %v2885 = vadd.f32 0.0, %v2884
  %v2886 = vpop.f32.mrb[0].mxu0
  %2887 = vmatprep.mubr.f32.mxu0 0.0
  %2888 = vmatmul.mubr.f32.gmra.mrb[0].mxu0 %v2511
  %v2889 = vpop.f32.mrb[0].mxu0
  %v2890 = vadd.f32 0.0, %v2889
  %v2891 = vpop.f32.mrb[0].mxu0
  %2892 = vmatprep.mubr.f32.mxu0 0.0
  %2893 = vmatmul.mubr.f32.gmra.mrb[0].mxu0 %v2514
  %v2894 = vpop.f32.mrb[0].mxu0
  %v2895 = vadd.f32 0.0, %v2894
  %v2896 = vpop.f32.mrb[0].mxu0
  %2897 = vmatprep.mubr.f32.mxu0 0.0
  %2898 = vmatmul.mubr.f32.gmra.mrb[0].mxu0 %v2517
  %v2899 = vpop.f32.mrb[0].mxu0
  %v2900 = vadd.f32 0.0, %v2899
  %v2901 = vpop.f32.mrb[0].mxu0
  %2902 = vmatprep.mubr.f32.mxu0 0.0
  %2903 = vmatmul.mubr.f32.gmra.mrb[0].mxu0 %v2520
  %v2904 = vpop.f32.mrb[0].mxu0
  %v2905 = vadd.f32 0.0, %v2904
  %v2906 = vpop.f32.mrb[0].mxu0
  %2907 = vmatprep.mubr.f32.mxu0 0.0
  %2908 = vmatmul.mubr.f32.gmra.mrb[0].mxu0 %v2523
  %v2909 = vpop.f32.mrb[0].mxu0
  %v2910 = vadd.f32 0.0, %v2909
  %v2911 = vpop.f32.mrb[0].mxu0
  %2912 = vdwg.mxu0
  %v2913 = vadd.f32 %v2203, %v2595
  %v2914 = vadd.f32 %v2204, %v2600
  %v2915 = vadd.f32 %v2205, %v2605
  %v2916 = vadd.f32 %v2206, %v2610
  %v2917 = vadd.f32 %v2207, %v2615
  %v2918 = vadd.f32 %v2208, %v2620
  %v2919 = vadd.f32 %v2209, %v2625
  %v2920 = vadd.f32 %v2210, %v2630
  %v2921 = vadd.f32 %v2211, %v2635
  %v2922 = vadd.f32 %v2212, %v2640
  %v2923 = vadd.f32 %v2213, %v2645
  %v2924 = vadd.f32 %v2214, %v2650
  %v2925 = vadd.f32 %v2215, %v2655
  %v2926 = vadd.f32 %v2216, %v2660
  %v2927 = vadd.f32 %v2217, %v2665
  %v2928 = vadd.f32 %v2218, %v2670
  %v2929 = vadd.f32 %v2219, %v2675
  %v2930 = vadd.f32 %v2220, %v2680
  %v2931 = vadd.f32 %v2221, %v2685
  %v2932 = vadd.f32 %v2222, %v2690
  %v2933 = vadd.f32 %v2223, %v2695
  %v2934 = vadd.f32 %v2224, %v2700
  %v2935 = vadd.f32 %v2225, %v2705
  %v2936 = vadd.f32 %v2226, %v2710
  %v2937 = vadd.f32 %v2227, %v2715
  %v2938 = vadd.f32 %v2228, %v2720
  %v2939 = vadd.f32 %v2229, %v2725
  %v2940 = vadd.f32 %v2230, %v2730
  %v2941 = vadd.f32 %v2231, %v2735
  %v2942 = vadd.f32 %v2232, %v2740
  %v2943 = vadd.f32 %v2233, %v2745
  %v2944 = vadd.f32 %v2234, %v2750
  %v2945 = vadd.f32 %v2235, %v2755
  %v2946 = vadd.f32 %v2236, %v2760
  %v2947 = vadd.f32 %v2237, %v2765
  %v2948 = vadd.f32 %v2238, %v2770
  %v2949 = vadd.f32 %v2239, %v2775
  %v2950 = vadd.f32 %v2240, %v2780
  %v2951 = vadd.f32 %v2241, %v2785
  %v2952 = vadd.f32 %v2242, %v2790
  %v2953 = vadd.f32 %v2243, %v2795
  %v2954 = vadd.f32 %v2244, %v2800
  %v2955 = vadd.f32 %v2245, %v2805
  %v2956 = vadd.f32 %v2246, %v2810
  %v2957 = vadd.f32 %v2247, %v2815
  %v2958 = vadd.f32 %v2248, %v2820
  %v2959 = vadd.f32 %v2249, %v2825
  %v2960 = vadd.f32 %v2250, %v2830
  %v2961 = vadd.f32 %v2251, %v2835
  %v2962 = vadd.f32 %v2252, %v2840
  %v2963 = vadd.f32 %v2253, %v2845
  %v2964 = vadd.f32 %v2254, %v2850
  %v2965 = vadd.f32 %v2255, %v2855
  %v2966 = vadd.f32 %v2256, %v2860
  %v2967 = vadd.f32 %v2257, %v2865
  %v2968 = vadd.f32 %v2258, %v2870
  %v2969 = vadd.f32 %v2259, %v2875
  %v2970 = vadd.f32 %v2260, %v2880
  %v2971 = vadd.f32 %v2261, %v2885
  %v2972 = vadd.f32 %v2262, %v2890
  %v2973 = vadd.f32 %v2263, %v2895
  %v2974 = vadd.f32 %v2264, %v2900
  %v2975 = vadd.f32 %v2265, %v2905
  %v2976 = vadd.f32 %v2266, %v2910
  %v2977 = vld [vmem:[%s200 + $0x1] sm:$0xff]
  %v2978 = vld [vmem:[%s200 + $0x9] sm:$0xff]
  %v2979 = vld [vmem:[%s200 + $0x19] sm:$0xff]
  %v2980 = vld [vmem:[%s200 + $0x21] sm:$0xff]
  %v2981 = vld [vmem:[%s200 + $0x31] sm:$0xff]
  %v2982 = vld [vmem:[%s200 + $0x39] sm:$0xff]
  %v2983 = vld [vmem:[%s200 + $0x49] sm:$0xff]
  %v2984 = vld [vmem:[%s200 + $0x51] sm:$0xff]
  %v2985 = vld [vmem:[%s200 + $0x61] sm:$0xff]
  %v2986 = vld [vmem:[%s200 + $0x69] sm:$0xff]
  %v2987 = vld [vmem:[%s200 + $0x79] sm:$0xff]
  %v2988 = vld [vmem:[%s200 + $0x81] sm:$0xff]
  %v2989 = vld [vmem:[%s200 + $0x91] sm:$0xff]
  %v2990 = vld [vmem:[%s200 + $0x99] sm:$0xff]
  %v2991 = vld [vmem:[%s200 + $0xa9] sm:$0xff]
  %v2992 = vld [vmem:[%s200 + $0xb1] sm:$0xff]
  %v2993 = vld [vmem:[%s200 + $0xc1] sm:$0xff]
  %v2994 = vld [vmem:[%s200 + $0xc9] sm:$0xff]
  %v2995 = vld [vmem:[%s200 + $0xd9] sm:$0xff]
  %v2996 = vld [vmem:[%s200 + $0xe1] sm:$0xff]
  %v2997 = vld [vmem:[%s200 + $0xf1] sm:$0xff]
  %v2998 = vld [vmem:[%s200 + $0xf9] sm:$0xff]
  %v2999 = vld [vmem:[%s200 + $0x109] sm:$0xff]
  %v3000 = vld [vmem:[%s200 + $0x111] sm:$0xff]
  %v3001 = vld [vmem:[%s200 + $0x121] sm:$0xff]
  %v3002 = vld [vmem:[%s200 + $0x129] sm:$0xff]
  %v3003 = vld [vmem:[%s200 + $0x139] sm:$0xff]
  %v3004 = vld [vmem:[%s200 + $0x141] sm:$0xff]
  %v3005 = vld [vmem:[%s200 + $0x151] sm:$0xff]
  %v3006 = vld [vmem:[%s200 + $0x159] sm:$0xff]
  %v3007 = vld [vmem:[%s200 + $0x169] sm:$0xff]
  %v3008 = vld [vmem:[%s200 + $0x171] sm:$0xff]
  %v3009 = vld [vmem:[%s200 + $0x1b1] sm:$0xff]
  %v3010 = vld [vmem:[%s200 + $0x1b9] sm:$0xff]
  %v3011 = vld [vmem:[%s200 + $0x1c9] sm:$0xff]
  %v3012 = vld [vmem:[%s200 + $0x1d1] sm:$0xff]
  %v3013 = vld [vmem:[%s200 + $0x1e1] sm:$0xff]
  %v3014 = vld [vmem:[%s200 + $0x1e9] sm:$0xff]
  %v3015 = vld [vmem:[%s200 + $0x1f9] sm:$0xff]
  %v3016 = vld [vmem:[%s200 + $0x201] sm:$0xff]
  %v3017 = vld [vmem:[%s200 + $0x211] sm:$0xff]
  %v3018 = vld [vmem:[%s200 + $0x219] sm:$0xff]
  %v3019 = vld [vmem:[%s200 + $0x229] sm:$0xff]
  %v3020 = vld [vmem:[%s200 + $0x231] sm:$0xff]
  %v3021 = vld [vmem:[%s200 + $0x241] sm:$0xff]
  %v3022 = vld [vmem:[%s200 + $0x249] sm:$0xff]
  %v3023 = vld [vmem:[%s200 + $0x259] sm:$0xff]
  %v3024 = vld [vmem:[%s200 + $0x261] sm:$0xff]
  %v3025 = vld [vmem:[%s200 + $0x271] sm:$0xff]
  %v3026 = vld [vmem:[%s200 + $0x279] sm:$0xff]
  %v3027 = vld [vmem:[%s200 + $0x289] sm:$0xff]
  %v3028 = vld [vmem:[%s200 + $0x291] sm:$0xff]
  %v3029 = vld [vmem:[%s200 + $0x2a1] sm:$0xff]
  %v3030 = vld [vmem:[%s200 + $0x2a9] sm:$0xff]
  %v3031 = vld [vmem:[%s200 + $0x2b9] sm:$0xff]
  %v3032 = vld [vmem:[%s200 + $0x2c1] sm:$0xff]
  %v3033 = vld [vmem:[%s200 + $0x2d1] sm:$0xff]
  %v3034 = vld [vmem:[%s200 + $0x2d9] sm:$0xff]
  %v3035 = vld [vmem:[%s200 + $0x2e9] sm:$0xff]
  %v3036 = vld [vmem:[%s200 + $0x2f1] sm:$0xff]
  %v3037 = vld [vmem:[%s200 + $0x301] sm:$0xff]
  %v3038 = vld [vmem:[%s200 + $0x309] sm:$0xff]
  %v3039 = vld [vmem:[%s200 + $0x319] sm:$0xff]
  %v3040 = vld [vmem:[%s200 + $0x321] sm:$0xff]
  %s3041 = scalar_lea.vmem %s1, 16
  %v3042 = vld [vmem:[%s3041] sm:$0xf]
  %v3044 = vsel %vm26, %v2977, 0
  %v3047 = vsel %vm26, %v2978, 0
  %v3050 = vsel %vm26, %v2979, 0
  %v3053 = vsel %vm26, %v2980, 0
  %v3056 = vsel %vm26, %v2981, 0
  %v3059 = vsel %vm26, %v2982, 0
  %v3062 = vsel %vm26, %v2983, 0
  %v3065 = vsel %vm26, %v2984, 0
  %v3068 = vsel %vm26, %v2985, 0
  %v3071 = vsel %vm26, %v2986, 0
  %v3074 = vsel %vm26, %v2987, 0
  %v3077 = vsel %vm26, %v2988, 0
  %v3080 = vsel %vm26, %v2989, 0
  %v3083 = vsel %vm26, %v2990, 0
  %v3086 = vsel %vm26, %v2991, 0
  %v3089 = vsel %vm26, %v2992, 0
  %v3092 = vsel %vm26, %v2993, 0
  %v3095 = vsel %vm26, %v2994, 0
  %v3098 = vsel %vm26, %v2995, 0
  %v3101 = vsel %vm26, %v2996, 0
  %v3104 = vsel %vm26, %v2997, 0
  %v3107 = vsel %vm26, %v2998, 0
  %v3110 = vsel %vm26, %v2999, 0
  %v3113 = vsel %vm26, %v3000, 0
  %v3116 = vsel %vm26, %v3001, 0
  %v3119 = vsel %vm26, %v3002, 0
  %v3122 = vsel %vm26, %v3003, 0
  %v3125 = vsel %vm26, %v3004, 0
  %v3128 = vsel %vm26, %v3005, 0
  %v3131 = vsel %vm26, %v3006, 0
  %v3134 = vsel %vm26, %v3007, 0
  %v3137 = vsel %vm26, %v3008, 0
  %v3140 = vsel %vm26, %v3009, 0
  %v3143 = vsel %vm26, %v3010, 0
  %v3146 = vsel %vm26, %v3011, 0
  %v3149 = vsel %vm26, %v3012, 0
  %v3152 = vsel %vm26, %v3013, 0
  %v3155 = vsel %vm26, %v3014, 0
  %v3158 = vsel %vm26, %v3015, 0
  %v3161 = vsel %vm26, %v3016, 0
  %v3164 = vsel %vm26, %v3017, 0
  %v3167 = vsel %vm26, %v3018, 0
  %v3170 = vsel %vm26, %v3019, 0
  %v3173 = vsel %vm26, %v3020, 0
  %v3176 = vsel %vm26, %v3021, 0
  %v3179 = vsel %vm26, %v3022, 0
  %v3182 = vsel %vm26, %v3023, 0
  %v3185 = vsel %vm26, %v3024, 0
  %v3188 = vsel %vm26, %v3025, 0
  %v3191 = vsel %vm26, %v3026, 0
  %v3194 = vsel %vm26, %v3027, 0
  %v3197 = vsel %vm26, %v3028, 0
  %v3200 = vsel %vm26, %v3029, 0
  %v3203 = vsel %vm26, %v3030, 0
  %v3206 = vsel %vm26, %v3031, 0
  %v3209 = vsel %vm26, %v3032, 0
  %v3212 = vsel %vm26, %v3033, 0
  %v3215 = vsel %vm26, %v3034, 0
  %v3218 = vsel %vm26, %v3035, 0
  %v3221 = vsel %vm26, %v3036, 0
  %v3224 = vsel %vm26, %v3037, 0
  %v3227 = vsel %vm26, %v3038, 0
  %v3230 = vsel %vm26, %v3039, 0
  %v3233 = vsel %vm26, %v3040, 0
  %v3236 = vsel %vm588, %v3042, 0
  %3238 = vmatprep.subr.mxu0 0.0
  %3239 = vmatpush1.msra.mxu0 %v3236
  %3240 = vmatprep.subr.mxu0 0.0
  %3241 = vmatpush1.msra.mxu0 0.0
  %3242 = vmatprep.subr.mxu0 0.0
  %3243 = vmatpush1.msra.mxu0 0.0
  %3244 = vmatprep.subr.mxu0 0.0
  %3245 = vmatpush1.msra.mxu0 0.0
  %3246 = vmatprep.subr.mxu0 0.0
  %3247 = vmatpush1.msra.mxu0 0.0
  %3248 = vmatprep.subr.mxu0 0.0
  %3249 = vmatpush1.msra.mxu0 0.0
  %3250 = vmatprep.subr.mxu0 0.0
  %3251 = vmatpush1.msra.mxu0 0.0
  %3252 = vmatprep.subr.mxu0 0.0
  %3253 = vmatpush1.msra.mxu0 0.0
  %3254 = vmatprep.subr.mxu0 0.0
  %3255 = vmatpush1.msra.mxu0 0.0
  %3256 = vmatprep.subr.mxu0 0.0
  %3257 = vmatpush1.msra.mxu0 0.0
  %3258 = vmatprep.subr.mxu0 0.0
  %3259 = vmatpush1.msra.mxu0 0.0
  %3260 = vmatprep.subr.mxu0 0.0
  %3261 = vmatpush1.msra.mxu0 0.0
  %3262 = vmatprep.subr.mxu0 0.0
  %3263 = vmatpush1.msra.mxu0 0.0
  %3264 = vmatprep.subr.mxu0 0.0
  %3265 = vmatpush1.msra.mxu0 0.0
  %3266 = vmatprep.subr.mxu0 0.0
  %3267 = vmatpush1.msra.mxu0 0.0
  %3268 = vmatprep.subr.mxu0 0.0
  %3269 = vmatpush1.msra.mxu0 0.0
  %3270 = vmatprep.subr.mxu0 0.0
  %3271 = vmatpush1.msra.mxu0 0.0
  %3272 = vmatprep.subr.mxu0 0.0
  %3273 = vmatpush1.msra.mxu0 0.0
  %3274 = vmatprep.subr.mxu0 0.0
  %3275 = vmatpush1.msra.mxu0 0.0
  %3276 = vmatprep.subr.mxu0 0.0
  %3277 = vmatpush1.msra.mxu0 0.0
  %3278 = vmatprep.subr.mxu0 0.0
  %3279 = vmatpush1.msra.mxu0 0.0
  %3280 = vmatprep.subr.mxu0 0.0
  %3281 = vmatpush1.msra.mxu0 0.0
  %3282 = vmatprep.subr.mxu0 0.0
  %3283 = vmatpush1.msra.mxu0 0.0
  %3284 = vmatprep.subr.mxu0 0.0
  %3285 = vmatpush1.msra.mxu0 0.0
  %3286 = vmatprep.subr.mxu0 0.0
  %3287 = vmatpush1.msra.mxu0 0.0
  %3288 = vmatprep.subr.mxu0 0.0
  %3289 = vmatpush1.msra.mxu0 0.0
  %3290 = vmatprep.subr.mxu0 0.0
  %3291 = vmatpush1.msra.mxu0 0.0
  %3292 = vmatprep.subr.mxu0 0.0
  %3293 = vmatpush1.msra.mxu0 0.0
  %3294 = vmatprep.subr.mxu0 0.0
  %3295 = vmatpush1.msra.mxu0 0.0
  %3296 = vmatprep.subr.mxu0 0.0
  %3297 = vmatpush1.msra.mxu0 0.0
  %3298 = vmatprep.subr.mxu0 0.0
  %3299 = vmatpush1.msra.mxu0 0.0
  %3300 = vmatprep.subr.mxu0 0.0
  %3301 = vmatpush1.msra.mxu0 0.0
  %3302 = vmatprep.mubr.f32.mxu0 0.0
  %3303 = vmatmul.mubr.f32.gmra.mrb[0].mxu0 %v3044
  %v3304 = vpop.f32.mrb[0].mxu0
  %v3305 = vadd.f32 0.0, %v3304
  %v3306 = vpop.f32.mrb[0].mxu0
  %3307 = vmatprep.mubr.f32.mxu0 0.0
  %3308 = vmatmul.mubr.f32.gmra.mrb[0].mxu0 %v3047
  %v3309 = vpop.f32.mrb[0].mxu0
  %v3310 = vadd.f32 0.0, %v3309
  %v3311 = vpop.f32.mrb[0].mxu0
  %3312 = vmatprep.mubr.f32.mxu0 0.0
  %3313 = vmatmul.mubr.f32.gmra.mrb[0].mxu0 %v3050
  %v3314 = vpop.f32.mrb[0].mxu0
  %v3315 = vadd.f32 0.0, %v3314
  %v3316 = vpop.f32.mrb[0].mxu0
  %3317 = vmatprep.mubr.f32.mxu0 0.0
  %3318 = vmatmul.mubr.f32.gmra.mrb[0].mxu0 %v3053
  %v3319 = vpop.f32.mrb[0].mxu0
  %v3320 = vadd.f32 0.0, %v3319
  %v3321 = vpop.f32.mrb[0].mxu0
  %3322 = vmatprep.mubr.f32.mxu0 0.0
  %3323 = vmatmul.mubr.f32.gmra.mrb[0].mxu0 %v3056
  %v3324 = vpop.f32.mrb[0].mxu0
  %v3325 = vadd.f32 0.0, %v3324
  %v3326 = vpop.f32.mrb[0].mxu0
  %3327 = vmatprep.mubr.f32.mxu0 0.0
  %3328 = vmatmul.mubr.f32.gmra.mrb[0].mxu0 %v3059
  %v3329 = vpop.f32.mrb[0].mxu0
  %v3330 = vadd.f32 0.0, %v3329
  %v3331 = vpop.f32.mrb[0].mxu0
  %3332 = vmatprep.mubr.f32.mxu0 0.0
  %3333 = vmatmul.mubr.f32.gmra.mrb[0].mxu0 %v3062
  %v3334 = vpop.f32.mrb[0].mxu0
  %v3335 = vadd.f32 0.0, %v3334
  %v3336 = vpop.f32.mrb[0].mxu0
  %3337 = vmatprep.mubr.f32.mxu0 0.0
  %3338 = vmatmul.mubr.f32.gmra.mrb[0].mxu0 %v3065
  %v3339 = vpop.f32.mrb[0].mxu0
  %v3340 = vadd.f32 0.0, %v3339
  %v3341 = vpop.f32.mrb[0].mxu0
  %3342 = vmatprep.mubr.f32.mxu0 0.0
  %3343 = vmatmul.mubr.f32.gmra.mrb[0].mxu0 %v3068
  %v3344 = vpop.f32.mrb[0].mxu0
  %v3345 = vadd.f32 0.0, %v3344
  %v3346 = vpop.f32.mrb[0].mxu0
  %3347 = vmatprep.mubr.f32.mxu0 0.0
  %3348 = vmatmul.mubr.f32.gmra.mrb[0].mxu0 %v3071
  %v3349 = vpop.f32.mrb[0].mxu0
  %v3350 = vadd.f32 0.0, %v3349
  %v3351 = vpop.f32.mrb[0].mxu0
  %3352 = vmatprep.mubr.f32.mxu0 0.0
  %3353 = vmatmul.mubr.f32.gmra.mrb[0].mxu0 %v3074
  %v3354 = vpop.f32.mrb[0].mxu0
  %v3355 = vadd.f32 0.0, %v3354
  %v3356 = vpop.f32.mrb[0].mxu0
  %3357 = vmatprep.mubr.f32.mxu0 0.0
  %3358 = vmatmul.mubr.f32.gmra.mrb[0].mxu0 %v3077
  %v3359 = vpop.f32.mrb[0].mxu0
  %v3360 = vadd.f32 0.0, %v3359
  %v3361 = vpop.f32.mrb[0].mxu0
  %3362 = vmatprep.mubr.f32.mxu0 0.0
  %3363 = vmatmul.mubr.f32.gmra.mrb[0].mxu0 %v3080
  %v3364 = vpop.f32.mrb[0].mxu0
  %v3365 = vadd.f32 0.0, %v3364
  %v3366 = vpop.f32.mrb[0].mxu0
  %3367 = vmatprep.mubr.f32.mxu0 0.0
  %3368 = vmatmul.mubr.f32.gmra.mrb[0].mxu0 %v3083
  %v3369 = vpop.f32.mrb[0].mxu0
  %v3370 = vadd.f32 0.0, %v3369
  %v3371 = vpop.f32.mrb[0].mxu0
  %3372 = vmatprep.mubr.f32.mxu0 0.0
  %3373 = vmatmul.mubr.f32.gmra.mrb[0].mxu0 %v3086
  %v3374 = vpop.f32.mrb[0].mxu0
  %v3375 = vadd.f32 0.0, %v3374
  %v3376 = vpop.f32.mrb[0].mxu0
  %3377 = vmatprep.mubr.f32.mxu0 0.0
  %3378 = vmatmul.mubr.f32.gmra.mrb[0].mxu0 %v3089
  %v3379 = vpop.f32.mrb[0].mxu0
  %v3380 = vadd.f32 0.0, %v3379
  %v3381 = vpop.f32.mrb[0].mxu0
  %3382 = vmatprep.mubr.f32.mxu0 0.0
  %3383 = vmatmul.mubr.f32.gmra.mrb[0].mxu0 %v3092
  %v3384 = vpop.f32.mrb[0].mxu0
  %v3385 = vadd.f32 0.0, %v3384
  %v3386 = vpop.f32.mrb[0].mxu0
  %3387 = vmatprep.mubr.f32.mxu0 0.0
  %3388 = vmatmul.mubr.f32.gmra.mrb[0].mxu0 %v3095
  %v3389 = vpop.f32.mrb[0].mxu0
  %v3390 = vadd.f32 0.0, %v3389
  %v3391 = vpop.f32.mrb[0].mxu0
  %3392 = vmatprep.mubr.f32.mxu0 0.0
  %3393 = vmatmul.mubr.f32.gmra.mrb[0].mxu0 %v3098
  %v3394 = vpop.f32.mrb[0].mxu0
  %v3395 = vadd.f32 0.0, %v3394
  %v3396 = vpop.f32.mrb[0].mxu0
  %3397 = vmatprep.mubr.f32.mxu0 0.0
  %3398 = vmatmul.mubr.f32.gmra.mrb[0].mxu0 %v3101
  %v3399 = vpop.f32.mrb[0].mxu0
  %v3400 = vadd.f32 0.0, %v3399
  %v3401 = vpop.f32.mrb[0].mxu0
  %3402 = vmatprep.mubr.f32.mxu0 0.0
  %3403 = vmatmul.mubr.f32.gmra.mrb[0].mxu0 %v3104
  %v3404 = vpop.f32.mrb[0].mxu0
  %v3405 = vadd.f32 0.0, %v3404
  %v3406 = vpop.f32.mrb[0].mxu0
  %3407 = vmatprep.mubr.f32.mxu0 0.0
  %3408 = vmatmul.mubr.f32.gmra.mrb[0].mxu0 %v3107
  %v3409 = vpop.f32.mrb[0].mxu0
  %v3410 = vadd.f32 0.0, %v3409
  %v3411 = vpop.f32.mrb[0].mxu0
  %3412 = vmatprep.mubr.f32.mxu0 0.0
  %3413 = vmatmul.mubr.f32.gmra.mrb[0].mxu0 %v3110
  %v3414 = vpop.f32.mrb[0].mxu0
  %v3415 = vadd.f32 0.0, %v3414
  %v3416 = vpop.f32.mrb[0].mxu0
  %3417 = vmatprep.mubr.f32.mxu0 0.0
  %3418 = vmatmul.mubr.f32.gmra.mrb[0].mxu0 %v3113
  %v3419 = vpop.f32.mrb[0].mxu0
  %v3420 = vadd.f32 0.0, %v3419
  %v3421 = vpop.f32.mrb[0].mxu0
  %3422 = vmatprep.mubr.f32.mxu0 0.0
  %3423 = vmatmul.mubr.f32.gmra.mrb[0].mxu0 %v3116
  %v3424 = vpop.f32.mrb[0].mxu0
  %v3425 = vadd.f32 0.0, %v3424
  %v3426 = vpop.f32.mrb[0].mxu0
  %3427 = vmatprep.mubr.f32.mxu0 0.0
  %3428 = vmatmul.mubr.f32.gmra.mrb[0].mxu0 %v3119
  %v3429 = vpop.f32.mrb[0].mxu0
  %v3430 = vadd.f32 0.0, %v3429
  %v3431 = vpop.f32.mrb[0].mxu0
  %3432 = vmatprep.mubr.f32.mxu0 0.0
  %3433 = vmatmul.mubr.f32.gmra.mrb[0].mxu0 %v3122
  %v3434 = vpop.f32.mrb[0].mxu0
  %v3435 = vadd.f32 0.0, %v3434
  %v3436 = vpop.f32.mrb[0].mxu0
  %3437 = vmatprep.mubr.f32.mxu0 0.0
  %3438 = vmatmul.mubr.f32.gmra.mrb[0].mxu0 %v3125
  %v3439 = vpop.f32.mrb[0].mxu0
  %v3440 = vadd.f32 0.0, %v3439
  %v3441 = vpop.f32.mrb[0].mxu0
  %3442 = vmatprep.mubr.f32.mxu0 0.0
  %3443 = vmatmul.mubr.f32.gmra.mrb[0].mxu0 %v3128
  %v3444 = vpop.f32.mrb[0].mxu0
  %v3445 = vadd.f32 0.0, %v3444
  %v3446 = vpop.f32.mrb[0].mxu0
  %3447 = vmatprep.mubr.f32.mxu0 0.0
  %3448 = vmatmul.mubr.f32.gmra.mrb[0].mxu0 %v3131
  %v3449 = vpop.f32.mrb[0].mxu0
  %v3450 = vadd.f32 0.0, %v3449
  %v3451 = vpop.f32.mrb[0].mxu0
  %3452 = vmatprep.mubr.f32.mxu0 0.0
  %3453 = vmatmul.mubr.f32.gmra.mrb[0].mxu0 %v3134
  %v3454 = vpop.f32.mrb[0].mxu0
  %v3455 = vadd.f32 0.0, %v3454
  %v3456 = vpop.f32.mrb[0].mxu0
  %3457 = vmatprep.mubr.f32.mxu0 0.0
  %3458 = vmatmul.mubr.f32.gmra.mrb[0].mxu0 %v3137
  %v3459 = vpop.f32.mrb[0].mxu0
  %v3460 = vadd.f32 0.0, %v3459
  %v3461 = vpop.f32.mrb[0].mxu0
  %3462 = vmatprep.mubr.f32.mxu0 0.0
  %3463 = vmatmul.mubr.f32.gmra.mrb[0].mxu0 %v3140
  %v3464 = vpop.f32.mrb[0].mxu0
  %v3465 = vadd.f32 0.0, %v3464
  %v3466 = vpop.f32.mrb[0].mxu0
  %3467 = vmatprep.mubr.f32.mxu0 0.0
  %3468 = vmatmul.mubr.f32.gmra.mrb[0].mxu0 %v3143
  %v3469 = vpop.f32.mrb[0].mxu0
  %v3470 = vadd.f32 0.0, %v3469
  %v3471 = vpop.f32.mrb[0].mxu0
  %3472 = vmatprep.mubr.f32.mxu0 0.0
  %3473 = vmatmul.mubr.f32.gmra.mrb[0].mxu0 %v3146
  %v3474 = vpop.f32.mrb[0].mxu0
  %v3475 = vadd.f32 0.0, %v3474
  %v3476 = vpop.f32.mrb[0].mxu0
  %3477 = vmatprep.mubr.f32.mxu0 0.0
  %3478 = vmatmul.mubr.f32.gmra.mrb[0].mxu0 %v3149
  %v3479 = vpop.f32.mrb[0].mxu0
  %v3480 = vadd.f32 0.0, %v3479
  %v3481 = vpop.f32.mrb[0].mxu0
  %3482 = vmatprep.mubr.f32.mxu0 0.0
  %3483 = vmatmul.mubr.f32.gmra.mrb[0].mxu0 %v3152
  %v3484 = vpop.f32.mrb[0].mxu0
  %v3485 = vadd.f32 0.0, %v3484
  %v3486 = vpop.f32.mrb[0].mxu0
  %3487 = vmatprep.mubr.f32.mxu0 0.0
  %3488 = vmatmul.mubr.f32.gmra.mrb[0].mxu0 %v3155
  %v3489 = vpop.f32.mrb[0].mxu0
  %v3490 = vadd.f32 0.0, %v3489
  %v3491 = vpop.f32.mrb[0].mxu0
  %3492 = vmatprep.mubr.f32.mxu0 0.0
  %3493 = vmatmul.mubr.f32.gmra.mrb[0].mxu0 %v3158
  %v3494 = vpop.f32.mrb[0].mxu0
  %v3495 = vadd.f32 0.0, %v3494
  %v3496 = vpop.f32.mrb[0].mxu0
  %3497 = vmatprep.mubr.f32.mxu0 0.0
  %3498 = vmatmul.mubr.f32.gmra.mrb[0].mxu0 %v3161
  %v3499 = vpop.f32.mrb[0].mxu0
  %v3500 = vadd.f32 0.0, %v3499
  %v3501 = vpop.f32.mrb[0].mxu0
  %3502 = vmatprep.mubr.f32.mxu0 0.0
  %3503 = vmatmul.mubr.f32.gmra.mrb[0].mxu0 %v3164
  %v3504 = vpop.f32.mrb[0].mxu0
  %v3505 = vadd.f32 0.0, %v3504
  %v3506 = vpop.f32.mrb[0].mxu0
  %3507 = vmatprep.mubr.f32.mxu0 0.0
  %3508 = vmatmul.mubr.f32.gmra.mrb[0].mxu0 %v3167
  %v3509 = vpop.f32.mrb[0].mxu0
  %v3510 = vadd.f32 0.0, %v3509
  %v3511 = vpop.f32.mrb[0].mxu0
  %3512 = vmatprep.mubr.f32.mxu0 0.0
  %3513 = vmatmul.mubr.f32.gmra.mrb[0].mxu0 %v3170
  %v3514 = vpop.f32.mrb[0].mxu0
  %v3515 = vadd.f32 0.0, %v3514
  %v3516 = vpop.f32.mrb[0].mxu0
  %3517 = vmatprep.mubr.f32.mxu0 0.0
  %3518 = vmatmul.mubr.f32.gmra.mrb[0].mxu0 %v3173
  %v3519 = vpop.f32.mrb[0].mxu0
  %v3520 = vadd.f32 0.0, %v3519
  %v3521 = vpop.f32.mrb[0].mxu0
  %3522 = vmatprep.mubr.f32.mxu0 0.0
  %3523 = vmatmul.mubr.f32.gmra.mrb[0].mxu0 %v3176
  %v3524 = vpop.f32.mrb[0].mxu0
  %v3525 = vadd.f32 0.0, %v3524
  %v3526 = vpop.f32.mrb[0].mxu0
  %3527 = vmatprep.mubr.f32.mxu0 0.0
  %3528 = vmatmul.mubr.f32.gmra.mrb[0].mxu0 %v3179
  %v3529 = vpop.f32.mrb[0].mxu0
  %v3530 = vadd.f32 0.0, %v3529
  %v3531 = vpop.f32.mrb[0].mxu0
  %3532 = vmatprep.mubr.f32.mxu0 0.0
  %3533 = vmatmul.mubr.f32.gmra.mrb[0].mxu0 %v3182
  %v3534 = vpop.f32.mrb[0].mxu0
  %v3535 = vadd.f32 0.0, %v3534
  %v3536 = vpop.f32.mrb[0].mxu0
  %3537 = vmatprep.mubr.f32.mxu0 0.0
  %3538 = vmatmul.mubr.f32.gmra.mrb[0].mxu0 %v3185
  %v3539 = vpop.f32.mrb[0].mxu0
  %v3540 = vadd.f32 0.0, %v3539
  %v3541 = vpop.f32.mrb[0].mxu0
  %3542 = vmatprep.mubr.f32.mxu0 0.0
  %3543 = vmatmul.mubr.f32.gmra.mrb[0].mxu0 %v3188
  %v3544 = vpop.f32.mrb[0].mxu0
  %v3545 = vadd.f32 0.0, %v3544
  %v3546 = vpop.f32.mrb[0].mxu0
  %3547 = vmatprep.mubr.f32.mxu0 0.0
  %3548 = vmatmul.mubr.f32.gmra.mrb[0].mxu0 %v3191
  %v3549 = vpop.f32.mrb[0].mxu0
  %v3550 = vadd.f32 0.0, %v3549
  %v3551 = vpop.f32.mrb[0].mxu0
  %3552 = vmatprep.mubr.f32.mxu0 0.0
  %3553 = vmatmul.mubr.f32.gmra.mrb[0].mxu0 %v3194
  %v3554 = vpop.f32.mrb[0].mxu0
  %v3555 = vadd.f32 0.0, %v3554
  %v3556 = vpop.f32.mrb[0].mxu0
  %3557 = vmatprep.mubr.f32.mxu0 0.0
  %3558 = vmatmul.mubr.f32.gmra.mrb[0].mxu0 %v3197
  %v3559 = vpop.f32.mrb[0].mxu0
  %v3560 = vadd.f32 0.0, %v3559
  %v3561 = vpop.f32.mrb[0].mxu0
  %3562 = vmatprep.mubr.f32.mxu0 0.0
  %3563 = vmatmul.mubr.f32.gmra.mrb[0].mxu0 %v3200
  %v3564 = vpop.f32.mrb[0].mxu0
  %v3565 = vadd.f32 0.0, %v3564
  %v3566 = vpop.f32.mrb[0].mxu0
  %3567 = vmatprep.mubr.f32.mxu0 0.0
  %3568 = vmatmul.mubr.f32.gmra.mrb[0].mxu0 %v3203
  %v3569 = vpop.f32.mrb[0].mxu0
  %v3570 = vadd.f32 0.0, %v3569
  %v3571 = vpop.f32.mrb[0].mxu0
  %3572 = vmatprep.mubr.f32.mxu0 0.0
  %3573 = vmatmul.mubr.f32.gmra.mrb[0].mxu0 %v3206
  %v3574 = vpop.f32.mrb[0].mxu0
  %v3575 = vadd.f32 0.0, %v3574
  %v3576 = vpop.f32.mrb[0].mxu0
  %3577 = vmatprep.mubr.f32.mxu0 0.0
  %3578 = vmatmul.mubr.f32.gmra.mrb[0].mxu0 %v3209
  %v3579 = vpop.f32.mrb[0].mxu0
  %v3580 = vadd.f32 0.0, %v3579
  %v3581 = vpop.f32.mrb[0].mxu0
  %3582 = vmatprep.mubr.f32.mxu0 0.0
  %3583 = vmatmul.mubr.f32.gmra.mrb[0].mxu0 %v3212
  %v3584 = vpop.f32.mrb[0].mxu0
  %v3585 = vadd.f32 0.0, %v3584
  %v3586 = vpop.f32.mrb[0].mxu0
  %3587 = vmatprep.mubr.f32.mxu0 0.0
  %3588 = vmatmul.mubr.f32.gmra.mrb[0].mxu0 %v3215
  %v3589 = vpop.f32.mrb[0].mxu0
  %v3590 = vadd.f32 0.0, %v3589
  %v3591 = vpop.f32.mrb[0].mxu0
  %3592 = vmatprep.mubr.f32.mxu0 0.0
  %3593 = vmatmul.mubr.f32.gmra.mrb[0].mxu0 %v3218
  %v3594 = vpop.f32.mrb[0].mxu0
  %v3595 = vadd.f32 0.0, %v3594
  %v3596 = vpop.f32.mrb[0].mxu0
  %3597 = vmatprep.mubr.f32.mxu0 0.0
  %3598 = vmatmul.mubr.f32.gmra.mrb[0].mxu0 %v3221
  %v3599 = vpop.f32.mrb[0].mxu0
  %v3600 = vadd.f32 0.0, %v3599
  %v3601 = vpop.f32.mrb[0].mxu0
  %3602 = vmatprep.mubr.f32.mxu0 0.0
  %3603 = vmatmul.mubr.f32.gmra.mrb[0].mxu0 %v3224
  %v3604 = vpop.f32.mrb[0].mxu0
  %v3605 = vadd.f32 0.0, %v3604
  %v3606 = vpop.f32.mrb[0].mxu0
  %3607 = vmatprep.mubr.f32.mxu0 0.0
  %3608 = vmatmul.mubr.f32.gmra.mrb[0].mxu0 %v3227
  %v3609 = vpop.f32.mrb[0].mxu0
  %v3610 = vadd.f32 0.0, %v3609
  %v3611 = vpop.f32.mrb[0].mxu0
  %3612 = vmatprep.mubr.f32.mxu0 0.0
  %3613 = vmatmul.mubr.f32.gmra.mrb[0].mxu0 %v3230
  %v3614 = vpop.f32.mrb[0].mxu0
  %v3615 = vadd.f32 0.0, %v3614
  %v3616 = vpop.f32.mrb[0].mxu0
  %3617 = vmatprep.mubr.f32.mxu0 0.0
  %3618 = vmatmul.mubr.f32.gmra.mrb[0].mxu0 %v3233
  %v3619 = vpop.f32.mrb[0].mxu0
  %v3620 = vadd.f32 0.0, %v3619
  %v3621 = vpop.f32.mrb[0].mxu0
  %3622 = vdwg.mxu0
  %v3623 = vadd.f32 %v2913, %v3305
  %v3624 = vadd.f32 %v2914, %v3310
  %v3625 = vadd.f32 %v2915, %v3315
  %v3626 = vadd.f32 %v2916, %v3320
  %v3627 = vadd.f32 %v2917, %v3325
  %v3628 = vadd.f32 %v2918, %v3330
  %v3629 = vadd.f32 %v2919, %v3335
  %v3630 = vadd.f32 %v2920, %v3340
  %v3631 = vadd.f32 %v2921, %v3345
  %v3632 = vadd.f32 %v2922, %v3350
  %v3633 = vadd.f32 %v2923, %v3355
  %v3634 = vadd.f32 %v2924, %v3360
  %v3635 = vadd.f32 %v2925, %v3365
  %v3636 = vadd.f32 %v2926, %v3370
  %v3637 = vadd.f32 %v2927, %v3375
  %v3638 = vadd.f32 %v2928, %v3380
  %v3639 = vadd.f32 %v2929, %v3385
  %v3640 = vadd.f32 %v2930, %v3390
  %v3641 = vadd.f32 %v2931, %v3395
  %v3642 = vadd.f32 %v2932, %v3400
  %v3643 = vadd.f32 %v2933, %v3405
  %v3644 = vadd.f32 %v2934, %v3410
  %v3645 = vadd.f32 %v2935, %v3415
  %v3646 = vadd.f32 %v2936, %v3420
  %v3647 = vadd.f32 %v2937, %v3425
  %v3648 = vadd.f32 %v2938, %v3430
  %v3649 = vadd.f32 %v2939, %v3435
  %v3650 = vadd.f32 %v2940, %v3440
  %v3651 = vadd.f32 %v2941, %v3445
  %v3652 = vadd.f32 %v2942, %v3450
  %v3653 = vadd.f32 %v2943, %v3455
  %v3654 = vadd.f32 %v2944, %v3460
  %v3655 = vadd.f32 %v2945, %v3465
  %v3656 = vadd.f32 %v2946, %v3470
  %v3657 = vadd.f32 %v2947, %v3475
  %v3658 = vadd.f32 %v2948, %v3480
  %v3659 = vadd.f32 %v2949, %v3485
  %v3660 = vadd.f32 %v2950, %v3490
  %v3661 = vadd.f32 %v2951, %v3495
  %v3662 = vadd.f32 %v2952, %v3500
  %v3663 = vadd.f32 %v2953, %v3505
  %v3664 = vadd.f32 %v2954, %v3510
  %v3665 = vadd.f32 %v2955, %v3515
  %v3666 = vadd.f32 %v2956, %v3520
  %v3667 = vadd.f32 %v2957, %v3525
  %v3668 = vadd.f32 %v2958, %v3530
  %v3669 = vadd.f32 %v2959, %v3535
  %v3670 = vadd.f32 %v2960, %v3540
  %v3671 = vadd.f32 %v2961, %v3545
  %v3672 = vadd.f32 %v2962, %v3550
  %v3673 = vadd.f32 %v2963, %v3555
  %v3674 = vadd.f32 %v2964, %v3560
  %v3675 = vadd.f32 %v2965, %v3565
  %v3676 = vadd.f32 %v2966, %v3570
  %v3677 = vadd.f32 %v2967, %v3575
  %v3678 = vadd.f32 %v2968, %v3580
  %v3679 = vadd.f32 %v2969, %v3585
  %v3680 = vadd.f32 %v2970, %v3590
  %v3681 = vadd.f32 %v2971, %v3595
  %v3682 = vadd.f32 %v2972, %v3600
  %v3683 = vadd.f32 %v2973, %v3605
  %v3684 = vadd.f32 %v2974, %v3610
  %v3685 = vadd.f32 %v2975, %v3615
  %v3686 = vadd.f32 %v2976, %v3620
  %v3687 = vld [vmem:[%s200 + $0x2] sm:$0xff]
  %v3688 = vld [vmem:[%s200 + $0xa] sm:$0xff]
  %v3689 = vld [vmem:[%s200 + $0x1a] sm:$0xff]
  %v3690 = vld [vmem:[%s200 + $0x22] sm:$0xff]
  %v3691 = vld [vmem:[%s200 + $0x32] sm:$0xff]
  %v3692 = vld [vmem:[%s200 + $0x3a] sm:$0xff]
  %v3693 = vld [vmem:[%s200 + $0x4a] sm:$0xff]
  %v3694 = vld [vmem:[%s200 + $0x52] sm:$0xff]
  %v3695 = vld [vmem:[%s200 + $0x62] sm:$0xff]
  %v3696 = vld [vmem:[%s200 + $0x6a] sm:$0xff]
  %v3697 = vld [vmem:[%s200 + $0x7a] sm:$0xff]
  %v3698 = vld [vmem:[%s200 + $0x82] sm:$0xff]
  %v3699 = vld [vmem:[%s200 + $0x92] sm:$0xff]
  %v3700 = vld [vmem:[%s200 + $0x9a] sm:$0xff]
  %v3701 = vld [vmem:[%s200 + $0xaa] sm:$0xff]
  %v3702 = vld [vmem:[%s200 + $0xb2] sm:$0xff]
  %v3703 = vld [vmem:[%s200 + $0xc2] sm:$0xff]
  %v3704 = vld [vmem:[%s200 + $0xca] sm:$0xff]
  %v3705 = vld [vmem:[%s200 + $0xda] sm:$0xff]
  %v3706 = vld [vmem:[%s200 + $0xe2] sm:$0xff]
  %v3707 = vld [vmem:[%s200 + $0xf2] sm:$0xff]
  %v3708 = vld [vmem:[%s200 + $0xfa] sm:$0xff]
  %v3709 = vld [vmem:[%s200 + $0x10a] sm:$0xff]
  %v3710 = vld [vmem:[%s200 + $0x112] sm:$0xff]
  %v3711 = vld [vmem:[%s200 + $0x122] sm:$0xff]
  %v3712 = vld [vmem:[%s200 + $0x12a] sm:$0xff]
  %v3713 = vld [vmem:[%s200 + $0x13a] sm:$0xff]
  %v3714 = vld [vmem:[%s200 + $0x142] sm:$0xff]
  %v3715 = vld [vmem:[%s200 + $0x152] sm:$0xff]
  %v3716 = vld [vmem:[%s200 + $0x15a] sm:$0xff]
  %v3717 = vld [vmem:[%s200 + $0x16a] sm:$0xff]
  %v3718 = vld [vmem:[%s200 + $0x172] sm:$0xff]
  %v3719 = vld [vmem:[%s200 + $0x1b2] sm:$0xff]
  %v3720 = vld [vmem:[%s200 + $0x1ba] sm:$0xff]
  %v3721 = vld [vmem:[%s200 + $0x1ca] sm:$0xff]
  %v3722 = vld [vmem:[%s200 + $0x1d2] sm:$0xff]
  %v3723 = vld [vmem:[%s200 + $0x1e2] sm:$0xff]
  %v3724 = vld [vmem:[%s200 + $0x1ea] sm:$0xff]
  %v3725 = vld [vmem:[%s200 + $0x1fa] sm:$0xff]
  %v3726 = vld [vmem:[%s200 + $0x202] sm:$0xff]
  %v3727 = vld [vmem:[%s200 + $0x212] sm:$0xff]
  %v3728 = vld [vmem:[%s200 + $0x21a] sm:$0xff]
  %v3729 = vld [vmem:[%s200 + $0x22a] sm:$0xff]
  %v3730 = vld [vmem:[%s200 + $0x232] sm:$0xff]
  %v3731 = vld [vmem:[%s200 + $0x242] sm:$0xff]
  %v3732 = vld [vmem:[%s200 + $0x24a] sm:$0xff]
  %v3733 = vld [vmem:[%s200 + $0x25a] sm:$0xff]
  %v3734 = vld [vmem:[%s200 + $0x262] sm:$0xff]
  %v3735 = vld [vmem:[%s200 + $0x272] sm:$0xff]
  %v3736 = vld [vmem:[%s200 + $0x27a] sm:$0xff]
  %v3737 = vld [vmem:[%s200 + $0x28a] sm:$0xff]
  %v3738 = vld [vmem:[%s200 + $0x292] sm:$0xff]
  %v3739 = vld [vmem:[%s200 + $0x2a2] sm:$0xff]
  %v3740 = vld [vmem:[%s200 + $0x2aa] sm:$0xff]
  %v3741 = vld [vmem:[%s200 + $0x2ba] sm:$0xff]
  %v3742 = vld [vmem:[%s200 + $0x2c2] sm:$0xff]
  %v3743 = vld [vmem:[%s200 + $0x2d2] sm:$0xff]
  %v3744 = vld [vmem:[%s200 + $0x2da] sm:$0xff]
  %v3745 = vld [vmem:[%s200 + $0x2ea] sm:$0xff]
  %v3746 = vld [vmem:[%s200 + $0x2f2] sm:$0xff]
  %v3747 = vld [vmem:[%s200 + $0x302] sm:$0xff]
  %v3748 = vld [vmem:[%s200 + $0x30a] sm:$0xff]
  %v3749 = vld [vmem:[%s200 + $0x31a] sm:$0xff]
  %v3750 = vld [vmem:[%s200 + $0x322] sm:$0xff]
  %s3751 = scalar_lea.vmem %s1, 20
  %v3752 = vld [vmem:[%s3751] sm:$0xf]
  %v3754 = vsel %vm26, %v3687, 0
  %v3757 = vsel %vm26, %v3688, 0
  %v3760 = vsel %vm26, %v3689, 0
  %v3763 = vsel %vm26, %v3690, 0
  %v3766 = vsel %vm26, %v3691, 0
  %v3769 = vsel %vm26, %v3692, 0
  %v3772 = vsel %vm26, %v3693, 0
  %v3775 = vsel %vm26, %v3694, 0
  %v3778 = vsel %vm26, %v3695, 0
  %v3781 = vsel %vm26, %v3696, 0
  %v3784 = vsel %vm26, %v3697, 0
  %v3787 = vsel %vm26, %v3698, 0
  %v3790 = vsel %vm26, %v3699, 0
  %v3793 = vsel %vm26, %v3700, 0
  %v3796 = vsel %vm26, %v3701, 0
  %v3799 = vsel %vm26, %v3702, 0
  %v3802 = vsel %vm26, %v3703, 0
  %v3805 = vsel %vm26, %v3704, 0
  %v3808 = vsel %vm26, %v3705, 0
  %v3811 = vsel %vm26, %v3706, 0
  %v3814 = vsel %vm26, %v3707, 0
  %v3817 = vsel %vm26, %v3708, 0
  %v3820 = vsel %vm26, %v3709, 0
  %v3823 = vsel %vm26, %v3710, 0
  %v3826 = vsel %vm26, %v3711, 0
  %v3829 = vsel %vm26, %v3712, 0
  %v3832 = vsel %vm26, %v3713, 0
  %v3835 = vsel %vm26, %v3714, 0
  %v3838 = vsel %vm26, %v3715, 0
  %v3841 = vsel %vm26, %v3716, 0
  %v3844 = vsel %vm26, %v3717, 0
  %v3847 = vsel %vm26, %v3718, 0
  %v3850 = vsel %vm26, %v3719, 0
  %v3853 = vsel %vm26, %v3720, 0
  %v3856 = vsel %vm26, %v3721, 0
  %v3859 = vsel %vm26, %v3722, 0
  %v3862 = vsel %vm26, %v3723, 0
  %v3865 = vsel %vm26, %v3724, 0
  %v3868 = vsel %vm26, %v3725, 0
  %v3871 = vsel %vm26, %v3726, 0
  %v3874 = vsel %vm26, %v3727, 0
  %v3877 = vsel %vm26, %v3728, 0
  %v3880 = vsel %vm26, %v3729, 0
  %v3883 = vsel %vm26, %v3730, 0
  %v3886 = vsel %vm26, %v3731, 0
  %v3889 = vsel %vm26, %v3732, 0
  %v3892 = vsel %vm26, %v3733, 0
  %v3895 = vsel %vm26, %v3734, 0
  %v3898 = vsel %vm26, %v3735, 0
  %v3901 = vsel %vm26, %v3736, 0
  %v3904 = vsel %vm26, %v3737, 0
  %v3907 = vsel %vm26, %v3738, 0
  %v3910 = vsel %vm26, %v3739, 0
  %v3913 = vsel %vm26, %v3740, 0
  %v3916 = vsel %vm26, %v3741, 0
  %v3919 = vsel %vm26, %v3742, 0
  %v3922 = vsel %vm26, %v3743, 0
  %v3925 = vsel %vm26, %v3744, 0
  %v3928 = vsel %vm26, %v3745, 0
  %v3931 = vsel %vm26, %v3746, 0
  %v3934 = vsel %vm26, %v3747, 0
  %v3937 = vsel %vm26, %v3748, 0
  %v3940 = vsel %vm26, %v3749, 0
  %v3943 = vsel %vm26, %v3750, 0
  %v3946 = vsel %vm588, %v3752, 0
  %3948 = vmatprep.subr.mxu0 0.0
  %3949 = vmatpush1.msra.mxu0 %v3946
  %3950 = vmatprep.subr.mxu0 0.0
  %3951 = vmatpush1.msra.mxu0 0.0
  %3952 = vmatprep.subr.mxu0 0.0
  %3953 = vmatpush1.msra.mxu0 0.0
  %3954 = vmatprep.subr.mxu0 0.0
  %3955 = vmatpush1.msra.mxu0 0.0
  %3956 = vmatprep.subr.mxu0 0.0
  %3957 = vmatpush1.msra.mxu0 0.0
  %3958 = vmatprep.subr.mxu0 0.0
  %3959 = vmatpush1.msra.mxu0 0.0
  %3960 = vmatprep.subr.mxu0 0.0
  %3961 = vmatpush1.msra.mxu0 0.0
  %3962 = vmatprep.subr.mxu0 0.0
  %3963 = vmatpush1.msra.mxu0 0.0
  %3964 = vmatprep.subr.mxu0 0.0
  %3965 = vmatpush1.msra.mxu0 0.0
  %3966 = vmatprep.subr.mxu0 0.0
  %3967 = vmatpush1.msra.mxu0 0.0
  %3968 = vmatprep.subr.mxu0 0.0
  %3969 = vmatpush1.msra.mxu0 0.0
  %3970 = vmatprep.subr.mxu0 0.0
  %3971 = vmatpush1.msra.mxu0 0.0
  %3972 = vmatprep.subr.mxu0 0.0
  %3973 = vmatpush1.msra.mxu0 0.0
  %3974 = vmatprep.subr.mxu0 0.0
  %3975 = vmatpush1.msra.mxu0 0.0
  %3976 = vmatprep.subr.mxu0 0.0
  %3977 = vmatpush1.msra.mxu0 0.0
  %3978 = vmatprep.subr.mxu0 0.0
  %3979 = vmatpush1.msra.mxu0 0.0
  %3980 = vmatprep.subr.mxu0 0.0
  %3981 = vmatpush1.msra.mxu0 0.0
  %3982 = vmatprep.subr.mxu0 0.0
  %3983 = vmatpush1.msra.mxu0 0.0
  %3984 = vmatprep.subr.mxu0 0.0
  %3985 = vmatpush1.msra.mxu0 0.0
  %3986 = vmatprep.subr.mxu0 0.0
  %3987 = vmatpush1.msra.mxu0 0.0
  %3988 = vmatprep.subr.mxu0 0.0
  %3989 = vmatpush1.msra.mxu0 0.0
  %3990 = vmatprep.subr.mxu0 0.0
  %3991 = vmatpush1.msra.mxu0 0.0
  %3992 = vmatprep.subr.mxu0 0.0
  %3993 = vmatpush1.msra.mxu0 0.0
  %3994 = vmatprep.subr.mxu0 0.0
  %3995 = vmatpush1.msra.mxu0 0.0
  %3996 = vmatprep.subr.mxu0 0.0
  %3997 = vmatpush1.msra.mxu0 0.0
  %3998 = vmatprep.subr.mxu0 0.0
  %3999 = vmatpush1.msra.mxu0 0.0
  %4000 = vmatprep.subr.mxu0 0.0
  %4001 = vmatpush1.msra.mxu0 0.0
  %4002 = vmatprep.subr.mxu0 0.0
  %4003 = vmatpush1.msra.mxu0 0.0
  %4004 = vmatprep.subr.mxu0 0.0
  %4005 = vmatpush1.msra.mxu0 0.0
  %4006 = vmatprep.subr.mxu0 0.0
  %4007 = vmatpush1.msra.mxu0 0.0
  %4008 = vmatprep.subr.mxu0 0.0
  %4009 = vmatpush1.msra.mxu0 0.0
  %4010 = vmatprep.subr.mxu0 0.0
  %4011 = vmatpush1.msra.mxu0 0.0
  %4012 = vmatprep.mubr.f32.mxu0 0.0
  %4013 = vmatmul.mubr.f32.gmra.mrb[0].mxu0 %v3754
  %v4014 = vpop.f32.mrb[0].mxu0
  %v4015 = vadd.f32 0.0, %v4014
  %v4016 = vpop.f32.mrb[0].mxu0
  %4017 = vmatprep.mubr.f32.mxu0 0.0
  %4018 = vmatmul.mubr.f32.gmra.mrb[0].mxu0 %v3757
  %v4019 = vpop.f32.mrb[0].mxu0
  %v4020 = vadd.f32 0.0, %v4019
  %v4021 = vpop.f32.mrb[0].mxu0
  %4022 = vmatprep.mubr.f32.mxu0 0.0
  %4023 = vmatmul.mubr.f32.gmra.mrb[0].mxu0 %v3760
  %v4024 = vpop.f32.mrb[0].mxu0
  %v4025 = vadd.f32 0.0, %v4024
  %v4026 = vpop.f32.mrb[0].mxu0
  %4027 = vmatprep.mubr.f32.mxu0 0.0
  %4028 = vmatmul.mubr.f32.gmra.mrb[0].mxu0 %v3763
  %v4029 = vpop.f32.mrb[0].mxu0
  %v4030 = vadd.f32 0.0, %v4029
  %v4031 = vpop.f32.mrb[0].mxu0
  %4032 = vmatprep.mubr.f32.mxu0 0.0
  %4033 = vmatmul.mubr.f32.gmra.mrb[0].mxu0 %v3766
  %v4034 = vpop.f32.mrb[0].mxu0
  %v4035 = vadd.f32 0.0, %v4034
  %v4036 = vpop.f32.mrb[0].mxu0
  %4037 = vmatprep.mubr.f32.mxu0 0.0
  %4038 = vmatmul.mubr.f32.gmra.mrb[0].mxu0 %v3769
  %v4039 = vpop.f32.mrb[0].mxu0
  %v4040 = vadd.f32 0.0, %v4039
  %v4041 = vpop.f32.mrb[0].mxu0
  %4042 = vmatprep.mubr.f32.mxu0 0.0
  %4043 = vmatmul.mubr.f32.gmra.mrb[0].mxu0 %v3772
  %v4044 = vpop.f32.mrb[0].mxu0
  %v4045 = vadd.f32 0.0, %v4044
  %v4046 = vpop.f32.mrb[0].mxu0
  %4047 = vmatprep.mubr.f32.mxu0 0.0
  %4048 = vmatmul.mubr.f32.gmra.mrb[0].mxu0 %v3775
  %v4049 = vpop.f32.mrb[0].mxu0
  %v4050 = vadd.f32 0.0, %v4049
  %v4051 = vpop.f32.mrb[0].mxu0
  %4052 = vmatprep.mubr.f32.mxu0 0.0
  %4053 = vmatmul.mubr.f32.gmra.mrb[0].mxu0 %v3778
  %v4054 = vpop.f32.mrb[0].mxu0
  %v4055 = vadd.f32 0.0, %v4054
  %v4056 = vpop.f32.mrb[0].mxu0
  %4057 = vmatprep.mubr.f32.mxu0 0.0
  %4058 = vmatmul.mubr.f32.gmra.mrb[0].mxu0 %v3781
  %v4059 = vpop.f32.mrb[0].mxu0
  %v4060 = vadd.f32 0.0, %v4059
  %v4061 = vpop.f32.mrb[0].mxu0
  %4062 = vmatprep.mubr.f32.mxu0 0.0
  %4063 = vmatmul.mubr.f32.gmra.mrb[0].mxu0 %v3784
  %v4064 = vpop.f32.mrb[0].mxu0
  %v4065 = vadd.f32 0.0, %v4064
  %v4066 = vpop.f32.mrb[0].mxu0
  %4067 = vmatprep.mubr.f32.mxu0 0.0
  %4068 = vmatmul.mubr.f32.gmra.mrb[0].mxu0 %v3787
  %v4069 = vpop.f32.mrb[0].mxu0
  %v4070 = vadd.f32 0.0, %v4069
  %v4071 = vpop.f32.mrb[0].mxu0
  %4072 = vmatprep.mubr.f32.mxu0 0.0
  %4073 = vmatmul.mubr.f32.gmra.mrb[0].mxu0 %v3790
  %v4074 = vpop.f32.mrb[0].mxu0
  %v4075 = vadd.f32 0.0, %v4074
  %v4076 = vpop.f32.mrb[0].mxu0
  %4077 = vmatprep.mubr.f32.mxu0 0.0
  %4078 = vmatmul.mubr.f32.gmra.mrb[0].mxu0 %v3793
  %v4079 = vpop.f32.mrb[0].mxu0
  %v4080 = vadd.f32 0.0, %v4079
  %v4081 = vpop.f32.mrb[0].mxu0
  %4082 = vmatprep.mubr.f32.mxu0 0.0
  %4083 = vmatmul.mubr.f32.gmra.mrb[0].mxu0 %v3796
  %v4084 = vpop.f32.mrb[0].mxu0
  %v4085 = vadd.f32 0.0, %v4084
  %v4086 = vpop.f32.mrb[0].mxu0
  %4087 = vmatprep.mubr.f32.mxu0 0.0
  %4088 = vmatmul.mubr.f32.gmra.mrb[0].mxu0 %v3799
  %v4089 = vpop.f32.mrb[0].mxu0
  %v4090 = vadd.f32 0.0, %v4089
  %v4091 = vpop.f32.mrb[0].mxu0
  %4092 = vmatprep.mubr.f32.mxu0 0.0
  %4093 = vmatmul.mubr.f32.gmra.mrb[0].mxu0 %v3802
  %v4094 = vpop.f32.mrb[0].mxu0
  %v4095 = vadd.f32 0.0, %v4094
  %v4096 = vpop.f32.mrb[0].mxu0
  %4097 = vmatprep.mubr.f32.mxu0 0.0
  %4098 = vmatmul.mubr.f32.gmra.mrb[0].mxu0 %v3805
  %v4099 = vpop.f32.mrb[0].mxu0
  %v4100 = vadd.f32 0.0, %v4099
  %v4101 = vpop.f32.mrb[0].mxu0
  %4102 = vmatprep.mubr.f32.mxu0 0.0
  %4103 = vmatmul.mubr.f32.gmra.mrb[0].mxu0 %v3808
  %v4104 = vpop.f32.mrb[0].mxu0
  %v4105 = vadd.f32 0.0, %v4104
  %v4106 = vpop.f32.mrb[0].mxu0
  %4107 = vmatprep.mubr.f32.mxu0 0.0
  %4108 = vmatmul.mubr.f32.gmra.mrb[0].mxu0 %v3811
  %v4109 = vpop.f32.mrb[0].mxu0
  %v4110 = vadd.f32 0.0, %v4109
  %v4111 = vpop.f32.mrb[0].mxu0
  %4112 = vmatprep.mubr.f32.mxu0 0.0
  %4113 = vmatmul.mubr.f32.gmra.mrb[0].mxu0 %v3814
  %v4114 = vpop.f32.mrb[0].mxu0
  %v4115 = vadd.f32 0.0, %v4114
  %v4116 = vpop.f32.mrb[0].mxu0
  %4117 = vmatprep.mubr.f32.mxu0 0.0
  %4118 = vmatmul.mubr.f32.gmra.mrb[0].mxu0 %v3817
  %v4119 = vpop.f32.mrb[0].mxu0
  %v4120 = vadd.f32 0.0, %v4119
  %v4121 = vpop.f32.mrb[0].mxu0
  %4122 = vmatprep.mubr.f32.mxu0 0.0
  %4123 = vmatmul.mubr.f32.gmra.mrb[0].mxu0 %v3820
  %v4124 = vpop.f32.mrb[0].mxu0
  %v4125 = vadd.f32 0.0, %v4124
  %v4126 = vpop.f32.mrb[0].mxu0
  %4127 = vmatprep.mubr.f32.mxu0 0.0
  %4128 = vmatmul.mubr.f32.gmra.mrb[0].mxu0 %v3823
  %v4129 = vpop.f32.mrb[0].mxu0
  %v4130 = vadd.f32 0.0, %v4129
  %v4131 = vpop.f32.mrb[0].mxu0
  %4132 = vmatprep.mubr.f32.mxu0 0.0
  %4133 = vmatmul.mubr.f32.gmra.mrb[0].mxu0 %v3826
  %v4134 = vpop.f32.mrb[0].mxu0
  %v4135 = vadd.f32 0.0, %v4134
  %v4136 = vpop.f32.mrb[0].mxu0
  %4137 = vmatprep.mubr.f32.mxu0 0.0
  %4138 = vmatmul.mubr.f32.gmra.mrb[0].mxu0 %v3829
  %v4139 = vpop.f32.mrb[0].mxu0
  %v4140 = vadd.f32 0.0, %v4139
  %v4141 = vpop.f32.mrb[0].mxu0
  %4142 = vmatprep.mubr.f32.mxu0 0.0
  %4143 = vmatmul.mubr.f32.gmra.mrb[0].mxu0 %v3832
  %v4144 = vpop.f32.mrb[0].mxu0
  %v4145 = vadd.f32 0.0, %v4144
  %v4146 = vpop.f32.mrb[0].mxu0
  %4147 = vmatprep.mubr.f32.mxu0 0.0
  %4148 = vmatmul.mubr.f32.gmra.mrb[0].mxu0 %v3835
  %v4149 = vpop.f32.mrb[0].mxu0
  %v4150 = vadd.f32 0.0, %v4149
  %v4151 = vpop.f32.mrb[0].mxu0
  %4152 = vmatprep.mubr.f32.mxu0 0.0
  %4153 = vmatmul.mubr.f32.gmra.mrb[0].mxu0 %v3838
  %v4154 = vpop.f32.mrb[0].mxu0
  %v4155 = vadd.f32 0.0, %v4154
  %v4156 = vpop.f32.mrb[0].mxu0
  %4157 = vmatprep.mubr.f32.mxu0 0.0
  %4158 = vmatmul.mubr.f32.gmra.mrb[0].mxu0 %v3841
  %v4159 = vpop.f32.mrb[0].mxu0
  %v4160 = vadd.f32 0.0, %v4159
  %v4161 = vpop.f32.mrb[0].mxu0
  %4162 = vmatprep.mubr.f32.mxu0 0.0
  %4163 = vmatmul.mubr.f32.gmra.mrb[0].mxu0 %v3844
  %v4164 = vpop.f32.mrb[0].mxu0
  %v4165 = vadd.f32 0.0, %v4164
  %v4166 = vpop.f32.mrb[0].mxu0
  %4167 = vmatprep.mubr.f32.mxu0 0.0
  %4168 = vmatmul.mubr.f32.gmra.mrb[0].mxu0 %v3847
  %v4169 = vpop.f32.mrb[0].mxu0
  %v4170 = vadd.f32 0.0, %v4169
  %v4171 = vpop.f32.mrb[0].mxu0
  %4172 = vmatprep.mubr.f32.mxu0 0.0
  %4173 = vmatmul.mubr.f32.gmra.mrb[0].mxu0 %v3850
  %v4174 = vpop.f32.mrb[0].mxu0
  %v4175 = vadd.f32 0.0, %v4174
  %v4176 = vpop.f32.mrb[0].mxu0
  %4177 = vmatprep.mubr.f32.mxu0 0.0
  %4178 = vmatmul.mubr.f32.gmra.mrb[0].mxu0 %v3853
  %v4179 = vpop.f32.mrb[0].mxu0
  %v4180 = vadd.f32 0.0, %v4179
  %v4181 = vpop.f32.mrb[0].mxu0
  %4182 = vmatprep.mubr.f32.mxu0 0.0
  %4183 = vmatmul.mubr.f32.gmra.mrb[0].mxu0 %v3856
  %v4184 = vpop.f32.mrb[0].mxu0
  %v4185 = vadd.f32 0.0, %v4184
  %v4186 = vpop.f32.mrb[0].mxu0
  %4187 = vmatprep.mubr.f32.mxu0 0.0
  %4188 = vmatmul.mubr.f32.gmra.mrb[0].mxu0 %v3859
  %v4189 = vpop.f32.mrb[0].mxu0
  %v4190 = vadd.f32 0.0, %v4189
  %v4191 = vpop.f32.mrb[0].mxu0
  %4192 = vmatprep.mubr.f32.mxu0 0.0
  %4193 = vmatmul.mubr.f32.gmra.mrb[0].mxu0 %v3862
  %v4194 = vpop.f32.mrb[0].mxu0
  %v4195 = vadd.f32 0.0, %v4194
  %v4196 = vpop.f32.mrb[0].mxu0
  %4197 = vmatprep.mubr.f32.mxu0 0.0
  %4198 = vmatmul.mubr.f32.gmra.mrb[0].mxu0 %v3865
  %v4199 = vpop.f32.mrb[0].mxu0
  %v4200 = vadd.f32 0.0, %v4199
  %v4201 = vpop.f32.mrb[0].mxu0
  %4202 = vmatprep.mubr.f32.mxu0 0.0
  %4203 = vmatmul.mubr.f32.gmra.mrb[0].mxu0 %v3868
  %v4204 = vpop.f32.mrb[0].mxu0
  %v4205 = vadd.f32 0.0, %v4204
  %v4206 = vpop.f32.mrb[0].mxu0
  %4207 = vmatprep.mubr.f32.mxu0 0.0
  %4208 = vmatmul.mubr.f32.gmra.mrb[0].mxu0 %v3871
  %v4209 = vpop.f32.mrb[0].mxu0
  %v4210 = vadd.f32 0.0, %v4209
  %v4211 = vpop.f32.mrb[0].mxu0
  %4212 = vmatprep.mubr.f32.mxu0 0.0
  %4213 = vmatmul.mubr.f32.gmra.mrb[0].mxu0 %v3874
  %v4214 = vpop.f32.mrb[0].mxu0
  %v4215 = vadd.f32 0.0, %v4214
  %v4216 = vpop.f32.mrb[0].mxu0
  %4217 = vmatprep.mubr.f32.mxu0 0.0
  %4218 = vmatmul.mubr.f32.gmra.mrb[0].mxu0 %v3877
  %v4219 = vpop.f32.mrb[0].mxu0
  %v4220 = vadd.f32 0.0, %v4219
  %v4221 = vpop.f32.mrb[0].mxu0
  %4222 = vmatprep.mubr.f32.mxu0 0.0
  %4223 = vmatmul.mubr.f32.gmra.mrb[0].mxu0 %v3880
  %v4224 = vpop.f32.mrb[0].mxu0
  %v4225 = vadd.f32 0.0, %v4224
  %v4226 = vpop.f32.mrb[0].mxu0
  %4227 = vmatprep.mubr.f32.mxu0 0.0
  %4228 = vmatmul.mubr.f32.gmra.mrb[0].mxu0 %v3883
  %v4229 = vpop.f32.mrb[0].mxu0
  %v4230 = vadd.f32 0.0, %v4229
  %v4231 = vpop.f32.mrb[0].mxu0
  %4232 = vmatprep.mubr.f32.mxu0 0.0
  %4233 = vmatmul.mubr.f32.gmra.mrb[0].mxu0 %v3886
  %v4234 = vpop.f32.mrb[0].mxu0
  %v4235 = vadd.f32 0.0, %v4234
  %v4236 = vpop.f32.mrb[0].mxu0
  %4237 = vmatprep.mubr.f32.mxu0 0.0
  %4238 = vmatmul.mubr.f32.gmra.mrb[0].mxu0 %v3889
  %v4239 = vpop.f32.mrb[0].mxu0
  %v4240 = vadd.f32 0.0, %v4239
  %v4241 = vpop.f32.mrb[0].mxu0
  %4242 = vmatprep.mubr.f32.mxu0 0.0
  %4243 = vmatmul.mubr.f32.gmra.mrb[0].mxu0 %v3892
  %v4244 = vpop.f32.mrb[0].mxu0
  %v4245 = vadd.f32 0.0, %v4244
  %v4246 = vpop.f32.mrb[0].mxu0
  %4247 = vmatprep.mubr.f32.mxu0 0.0
  %4248 = vmatmul.mubr.f32.gmra.mrb[0].mxu0 %v3895
  %v4249 = vpop.f32.mrb[0].mxu0
  %v4250 = vadd.f32 0.0, %v4249
  %v4251 = vpop.f32.mrb[0].mxu0
  %4252 = vmatprep.mubr.f32.mxu0 0.0
  %4253 = vmatmul.mubr.f32.gmra.mrb[0].mxu0 %v3898
  %v4254 = vpop.f32.mrb[0].mxu0
  %v4255 = vadd.f32 0.0, %v4254
  %v4256 = vpop.f32.mrb[0].mxu0
  %4257 = vmatprep.mubr.f32.mxu0 0.0
  %4258 = vmatmul.mubr.f32.gmra.mrb[0].mxu0 %v3901
  %v4259 = vpop.f32.mrb[0].mxu0
  %v4260 = vadd.f32 0.0, %v4259
  %v4261 = vpop.f32.mrb[0].mxu0
  %4262 = vmatprep.mubr.f32.mxu0 0.0
  %4263 = vmatmul.mubr.f32.gmra.mrb[0].mxu0 %v3904
  %v4264 = vpop.f32.mrb[0].mxu0
  %v4265 = vadd.f32 0.0, %v4264
  %v4266 = vpop.f32.mrb[0].mxu0
  %4267 = vmatprep.mubr.f32.mxu0 0.0
  %4268 = vmatmul.mubr.f32.gmra.mrb[0].mxu0 %v3907
  %v4269 = vpop.f32.mrb[0].mxu0
  %v4270 = vadd.f32 0.0, %v4269
  %v4271 = vpop.f32.mrb[0].mxu0
  %4272 = vmatprep.mubr.f32.mxu0 0.0
  %4273 = vmatmul.mubr.f32.gmra.mrb[0].mxu0 %v3910
  %v4274 = vpop.f32.mrb[0].mxu0
  %v4275 = vadd.f32 0.0, %v4274
  %v4276 = vpop.f32.mrb[0].mxu0
  %4277 = vmatprep.mubr.f32.mxu0 0.0
  %4278 = vmatmul.mubr.f32.gmra.mrb[0].mxu0 %v3913
  %v4279 = vpop.f32.mrb[0].mxu0
  %v4280 = vadd.f32 0.0, %v4279
  %v4281 = vpop.f32.mrb[0].mxu0
  %4282 = vmatprep.mubr.f32.mxu0 0.0
  %4283 = vmatmul.mubr.f32.gmra.mrb[0].mxu0 %v3916
  %v4284 = vpop.f32.mrb[0].mxu0
  %v4285 = vadd.f32 0.0, %v4284
  %v4286 = vpop.f32.mrb[0].mxu0
  %4287 = vmatprep.mubr.f32.mxu0 0.0
  %4288 = vmatmul.mubr.f32.gmra.mrb[0].mxu0 %v3919
  %v4289 = vpop.f32.mrb[0].mxu0
  %v4290 = vadd.f32 0.0, %v4289
  %v4291 = vpop.f32.mrb[0].mxu0
  %4292 = vmatprep.mubr.f32.mxu0 0.0
  %4293 = vmatmul.mubr.f32.gmra.mrb[0].mxu0 %v3922
  %v4294 = vpop.f32.mrb[0].mxu0
  %v4295 = vadd.f32 0.0, %v4294
  %v4296 = vpop.f32.mrb[0].mxu0
  %4297 = vmatprep.mubr.f32.mxu0 0.0
  %4298 = vmatmul.mubr.f32.gmra.mrb[0].mxu0 %v3925
  %v4299 = vpop.f32.mrb[0].mxu0
  %v4300 = vadd.f32 0.0, %v4299
  %v4301 = vpop.f32.mrb[0].mxu0
  %4302 = vmatprep.mubr.f32.mxu0 0.0
  %4303 = vmatmul.mubr.f32.gmra.mrb[0].mxu0 %v3928
  %v4304 = vpop.f32.mrb[0].mxu0
  %v4305 = vadd.f32 0.0, %v4304
  %v4306 = vpop.f32.mrb[0].mxu0
  %4307 = vmatprep.mubr.f32.mxu0 0.0
  %4308 = vmatmul.mubr.f32.gmra.mrb[0].mxu0 %v3931
  %v4309 = vpop.f32.mrb[0].mxu0
  %v4310 = vadd.f32 0.0, %v4309
  %v4311 = vpop.f32.mrb[0].mxu0
  %4312 = vmatprep.mubr.f32.mxu0 0.0
  %4313 = vmatmul.mubr.f32.gmra.mrb[0].mxu0 %v3934
  %v4314 = vpop.f32.mrb[0].mxu0
  %v4315 = vadd.f32 0.0, %v4314
  %v4316 = vpop.f32.mrb[0].mxu0
  %4317 = vmatprep.mubr.f32.mxu0 0.0
  %4318 = vmatmul.mubr.f32.gmra.mrb[0].mxu0 %v3937
  %v4319 = vpop.f32.mrb[0].mxu0
  %v4320 = vadd.f32 0.0, %v4319
  %v4321 = vpop.f32.mrb[0].mxu0
  %4322 = vmatprep.mubr.f32.mxu0 0.0
  %4323 = vmatmul.mubr.f32.gmra.mrb[0].mxu0 %v3940
  %v4324 = vpop.f32.mrb[0].mxu0
  %v4325 = vadd.f32 0.0, %v4324
  %v4326 = vpop.f32.mrb[0].mxu0
  %4327 = vmatprep.mubr.f32.mxu0 0.0
  %4328 = vmatmul.mubr.f32.gmra.mrb[0].mxu0 %v3943
  %v4329 = vpop.f32.mrb[0].mxu0
  %v4330 = vadd.f32 0.0, %v4329
  %v4331 = vpop.f32.mrb[0].mxu0
  %4332 = vdwg.mxu0
  %v4333 = vadd.f32 %v3623, %v4015
  %v4334 = vadd.f32 %v3624, %v4020
  %v4335 = vadd.f32 %v3625, %v4025
  %v4336 = vadd.f32 %v3626, %v4030
  %v4337 = vadd.f32 %v3627, %v4035
  %v4338 = vadd.f32 %v3628, %v4040
  %v4339 = vadd.f32 %v3629, %v4045
  %v4340 = vadd.f32 %v3630, %v4050
  %v4341 = vadd.f32 %v3631, %v4055
  %v4342 = vadd.f32 %v3632, %v4060
  %v4343 = vadd.f32 %v3633, %v4065
  %v4344 = vadd.f32 %v3634, %v4070
  %v4345 = vadd.f32 %v3635, %v4075
  %v4346 = vadd.f32 %v3636, %v4080
  %v4347 = vadd.f32 %v3637, %v4085
  %v4348 = vadd.f32 %v3638, %v4090
  %v4349 = vadd.f32 %v3639, %v4095
  %v4350 = vadd.f32 %v3640, %v4100
  %v4351 = vadd.f32 %v3641, %v4105
  %v4352 = vadd.f32 %v3642, %v4110
  %v4353 = vadd.f32 %v3643, %v4115
  %v4354 = vadd.f32 %v3644, %v4120
  %v4355 = vadd.f32 %v3645, %v4125
  %v4356 = vadd.f32 %v3646, %v4130
  %v4357 = vadd.f32 %v3647, %v4135
  %v4358 = vadd.f32 %v3648, %v4140
  %v4359 = vadd.f32 %v3649, %v4145
  %v4360 = vadd.f32 %v3650, %v4150
  %v4361 = vadd.f32 %v3651, %v4155
  %v4362 = vadd.f32 %v3652, %v4160
  %v4363 = vadd.f32 %v3653, %v4165
  %v4364 = vadd.f32 %v3654, %v4170
  %v4365 = vadd.f32 %v3655, %v4175
  %v4366 = vadd.f32 %v3656, %v4180
  %v4367 = vadd.f32 %v3657, %v4185
  %v4368 = vadd.f32 %v3658, %v4190
  %v4369 = vadd.f32 %v3659, %v4195
  %v4370 = vadd.f32 %v3660, %v4200
  %v4371 = vadd.f32 %v3661, %v4205
  %v4372 = vadd.f32 %v3662, %v4210
  %v4373 = vadd.f32 %v3663, %v4215
  %v4374 = vadd.f32 %v3664, %v4220
  %v4375 = vadd.f32 %v3665, %v4225
  %v4376 = vadd.f32 %v3666, %v4230
  %v4377 = vadd.f32 %v3667, %v4235
  %v4378 = vadd.f32 %v3668, %v4240
  %v4379 = vadd.f32 %v3669, %v4245
  %v4380 = vadd.f32 %v3670, %v4250
  %v4381 = vadd.f32 %v3671, %v4255
  %v4382 = vadd.f32 %v3672, %v4260
  %v4383 = vadd.f32 %v3673, %v4265
  %v4384 = vadd.f32 %v3674, %v4270
  %v4385 = vadd.f32 %v3675, %v4275
  %v4386 = vadd.f32 %v3676, %v4280
  %v4387 = vadd.f32 %v3677, %v4285
  %v4388 = vadd.f32 %v3678, %v4290
  %v4389 = vadd.f32 %v3679, %v4295
  %v4390 = vadd.f32 %v3680, %v4300
  %v4391 = vadd.f32 %v3681, %v4305
  %v4392 = vadd.f32 %v3682, %v4310
  %v4393 = vadd.f32 %v3683, %v4315
  %v4394 = vadd.f32 %v3684, %v4320
  %v4395 = vadd.f32 %v3685, %v4325
  %v4396 = vadd.f32 %v3686, %v4330
  %s4397 = scalar_lea.vmem [#allocation2], 48
  %v4398 = vld [vmem:[%s4397] sm:$0xff]
  %v4399 = vld [vmem:[%s4397 + $0x8] sm:$0xff]
  %v4400 = vld [vmem:[%s4397 + $0x18] sm:$0xff]
  %v4401 = vld [vmem:[%s4397 + $0x20] sm:$0xff]
  %v4402 = vld [vmem:[%s4397 + $0x30] sm:$0xff]
  %v4403 = vld [vmem:[%s4397 + $0x38] sm:$0xff]
  %v4404 = vld [vmem:[%s4397 + $0x48] sm:$0xff]
  %v4405 = vld [vmem:[%s4397 + $0x50] sm:$0xff]
  %v4406 = vld [vmem:[%s4397 + $0x60] sm:$0xff]
  %v4407 = vld [vmem:[%s4397 + $0x68] sm:$0xff]
  %v4408 = vld [vmem:[%s4397 + $0x78] sm:$0xff]
  %v4409 = vld [vmem:[%s4397 + $0x80] sm:$0xff]
  %v4410 = vld [vmem:[%s4397 + $0x90] sm:$0xff]
  %v4411 = vld [vmem:[%s4397 + $0x98] sm:$0xff]
  %v4412 = vld [vmem:[%s4397 + $0xa8] sm:$0xff]
  %v4413 = vld [vmem:[%s4397 + $0xb0] sm:$0xff]
  %v4414 = vld [vmem:[%s4397 + $0xc0] sm:$0xff]
  %v4415 = vld [vmem:[%s4397 + $0xc8] sm:$0xff]
  %v4416 = vld [vmem:[%s4397 + $0xd8] sm:$0xff]
  %v4417 = vld [vmem:[%s4397 + $0xe0] sm:$0xff]
  %v4418 = vld [vmem:[%s4397 + $0xf0] sm:$0xff]
  %v4419 = vld [vmem:[%s4397 + $0xf8] sm:$0xff]
  %v4420 = vld [vmem:[%s4397 + $0x108] sm:$0xff]
  %v4421 = vld [vmem:[%s4397 + $0x110] sm:$0xff]
  %v4422 = vld [vmem:[%s4397 + $0x120] sm:$0xff]
  %v4423 = vld [vmem:[%s4397 + $0x128] sm:$0xff]
  %v4424 = vld [vmem:[%s4397 + $0x138] sm:$0xff]
  %v4425 = vld [vmem:[%s4397 + $0x140] sm:$0xff]
  %v4426 = vld [vmem:[%s4397 + $0x150] sm:$0xff]
  %v4427 = vld [vmem:[%s4397 + $0x158] sm:$0xff]
  %v4428 = vld [vmem:[%s4397 + $0x168] sm:$0xff]
  %v4429 = vld [vmem:[%s4397 + $0x170] sm:$0xff]
  %v4430 = vld [vmem:[%s4397 + $0x1b0] sm:$0xff]
  %v4431 = vld [vmem:[%s4397 + $0x1b8] sm:$0xff]
  %v4432 = vld [vmem:[%s4397 + $0x1c8] sm:$0xff]
  %v4433 = vld [vmem:[%s4397 + $0x1d0] sm:$0xff]
  %v4434 = vld [vmem:[%s4397 + $0x1e0] sm:$0xff]
  %v4435 = vld [vmem:[%s4397 + $0x1e8] sm:$0xff]
  %v4436 = vld [vmem:[%s4397 + $0x1f8] sm:$0xff]
  %v4437 = vld [vmem:[%s4397 + $0x200] sm:$0xff]
  %v4438 = vld [vmem:[%s4397 + $0x210] sm:$0xff]
  %v4439 = vld [vmem:[%s4397 + $0x218] sm:$0xff]
  %v4440 = vld [vmem:[%s4397 + $0x228] sm:$0xff]
  %v4441 = vld [vmem:[%s4397 + $0x230] sm:$0xff]
  %v4442 = vld [vmem:[%s4397 + $0x240] sm:$0xff]
  %v4443 = vld [vmem:[%s4397 + $0x248] sm:$0xff]
  %v4444 = vld [vmem:[%s4397 + $0x258] sm:$0xff]
  %v4445 = vld [vmem:[%s4397 + $0x260] sm:$0xff]
  %v4446 = vld [vmem:[%s4397 + $0x270] sm:$0xff]
  %v4447 = vld [vmem:[%s4397 + $0x278] sm:$0xff]
  %v4448 = vld [vmem:[%s4397 + $0x288] sm:$0xff]
  %v4449 = vld [vmem:[%s4397 + $0x290] sm:$0xff]
  %v4450 = vld [vmem:[%s4397 + $0x2a0] sm:$0xff]
  %v4451 = vld [vmem:[%s4397 + $0x2a8] sm:$0xff]
  %v4452 = vld [vmem:[%s4397 + $0x2b8] sm:$0xff]
  %v4453 = vld [vmem:[%s4397 + $0x2c0] sm:$0xff]
  %v4454 = vld [vmem:[%s4397 + $0x2d0] sm:$0xff]
  %v4455 = vld [vmem:[%s4397 + $0x2d8] sm:$0xff]
  %v4456 = vld [vmem:[%s4397 + $0x2e8] sm:$0xff]
  %v4457 = vld [vmem:[%s4397 + $0x2f0] sm:$0xff]
  %v4458 = vld [vmem:[%s4397 + $0x300] sm:$0xff]
  %v4459 = vld [vmem:[%s4397 + $0x308] sm:$0xff]
  %v4460 = vld [vmem:[%s4397 + $0x318] sm:$0xff]
  %v4461 = vld [vmem:[%s4397 + $0x320] sm:$0xff]
  %s4462 = scalar_lea.vmem %s1, 24
  %v4463 = vld [vmem:[%s4462] sm:$0xf]
  %v4465 = vsel %vm26, %v4398, 0
  %v4468 = vsel %vm26, %v4399, 0
  %v4471 = vsel %vm26, %v4400, 0
  %v4474 = vsel %vm26, %v4401, 0
  %v4477 = vsel %vm26, %v4402, 0
  %v4480 = vsel %vm26, %v4403, 0
  %v4483 = vsel %vm26, %v4404, 0
  %v4486 = vsel %vm26, %v4405, 0
  %v4489 = vsel %vm26, %v4406, 0
  %v4492 = vsel %vm26, %v4407, 0
  %v4495 = vsel %vm26, %v4408, 0
  %v4498 = vsel %vm26, %v4409, 0
  %v4501 = vsel %vm26, %v4410, 0
  %v4504 = vsel %vm26, %v4411, 0
  %v4507 = vsel %vm26, %v4412, 0
  %v4510 = vsel %vm26, %v4413, 0
  %v4513 = vsel %vm26, %v4414, 0
  %v4516 = vsel %vm26, %v4415, 0
  %v4519 = vsel %vm26, %v4416, 0
  %v4522 = vsel %vm26, %v4417, 0
  %v4525 = vsel %vm26, %v4418, 0
  %v4528 = vsel %vm26, %v4419, 0
  %v4531 = vsel %vm26, %v4420, 0
  %v4534 = vsel %vm26, %v4421, 0
  %v4537 = vsel %vm26, %v4422, 0
  %v4540 = vsel %vm26, %v4423, 0
  %v4543 = vsel %vm26, %v4424, 0
  %v4546 = vsel %vm26, %v4425, 0
  %v4549 = vsel %vm26, %v4426, 0
  %v4552 = vsel %vm26, %v4427, 0
  %v4555 = vsel %vm26, %v4428, 0
  %v4558 = vsel %vm26, %v4429, 0
  %v4561 = vsel %vm26, %v4430, 0
  %v4564 = vsel %vm26, %v4431, 0
  %v4567 = vsel %vm26, %v4432, 0
  %v4570 = vsel %vm26, %v4433, 0
  %v4573 = vsel %vm26, %v4434, 0
  %v4576 = vsel %vm26, %v4435, 0
  %v4579 = vsel %vm26, %v4436, 0
  %v4582 = vsel %vm26, %v4437, 0
  %v4585 = vsel %vm26, %v4438, 0
  %v4588 = vsel %vm26, %v4439, 0
  %v4591 = vsel %vm26, %v4440, 0
  %v4594 = vsel %vm26, %v4441, 0
  %v4597 = vsel %vm26, %v4442, 0
  %v4600 = vsel %vm26, %v4443, 0
  %v4603 = vsel %vm26, %v4444, 0
  %v4606 = vsel %vm26, %v4445, 0
  %v4609 = vsel %vm26, %v4446, 0
  %v4612 = vsel %vm26, %v4447, 0
  %v4615 = vsel %vm26, %v4448, 0
  %v4618 = vsel %vm26, %v4449, 0
  %v4621 = vsel %vm26, %v4450, 0
  %v4624 = vsel %vm26, %v4451, 0
  %v4627 = vsel %vm26, %v4452, 0
  %v4630 = vsel %vm26, %v4453, 0
  %v4633 = vsel %vm26, %v4454, 0
  %v4636 = vsel %vm26, %v4455, 0
  %v4639 = vsel %vm26, %v4456, 0
  %v4642 = vsel %vm26, %v4457, 0
  %v4645 = vsel %vm26, %v4458, 0
  %v4648 = vsel %vm26, %v4459, 0
  %v4651 = vsel %vm26, %v4460, 0
  %v4654 = vsel %vm26, %v4461, 0
  %v4657 = vsel %vm588, %v4463, 0
  %4659 = vmatprep.subr.mxu0 0.0
  %4660 = vmatpush1.msra.mxu0 %v4657
  %4661 = vmatprep.subr.mxu0 0.0
  %4662 = vmatpush1.msra.mxu0 0.0
  %4663 = vmatprep.subr.mxu0 0.0
  %4664 = vmatpush1.msra.mxu0 0.0
  %4665 = vmatprep.subr.mxu0 0.0
  %4666 = vmatpush1.msra.mxu0 0.0
  %4667 = vmatprep.subr.mxu0 0.0
  %4668 = vmatpush1.msra.mxu0 0.0
  %4669 = vmatprep.subr.mxu0 0.0
  %4670 = vmatpush1.msra.mxu0 0.0
  %4671 = vmatprep.subr.mxu0 0.0
  %4672 = vmatpush1.msra.mxu0 0.0
  %4673 = vmatprep.subr.mxu0 0.0
  %4674 = vmatpush1.msra.mxu0 0.0
  %4675 = vmatprep.subr.mxu0 0.0
  %4676 = vmatpush1.msra.mxu0 0.0
  %4677 = vmatprep.subr.mxu0 0.0
  %4678 = vmatpush1.msra.mxu0 0.0
  %4679 = vmatprep.subr.mxu0 0.0
  %4680 = vmatpush1.msra.mxu0 0.0
  %4681 = vmatprep.subr.mxu0 0.0
  %4682 = vmatpush1.msra.mxu0 0.0
  %4683 = vmatprep.subr.mxu0 0.0
  %4684 = vmatpush1.msra.mxu0 0.0
  %4685 = vmatprep.subr.mxu0 0.0
  %4686 = vmatpush1.msra.mxu0 0.0
  %4687 = vmatprep.subr.mxu0 0.0
  %4688 = vmatpush1.msra.mxu0 0.0
  %4689 = vmatprep.subr.mxu0 0.0
  %4690 = vmatpush1.msra.mxu0 0.0
  %4691 = vmatprep.subr.mxu0 0.0
  %4692 = vmatpush1.msra.mxu0 0.0
  %4693 = vmatprep.subr.mxu0 0.0
  %4694 = vmatpush1.msra.mxu0 0.0
  %4695 = vmatprep.subr.mxu0 0.0
  %4696 = vmatpush1.msra.mxu0 0.0
  %4697 = vmatprep.subr.mxu0 0.0
  %4698 = vmatpush1.msra.mxu0 0.0
  %4699 = vmatprep.subr.mxu0 0.0
  %4700 = vmatpush1.msra.mxu0 0.0
  %4701 = vmatprep.subr.mxu0 0.0
  %4702 = vmatpush1.msra.mxu0 0.0
  %4703 = vmatprep.subr.mxu0 0.0
  %4704 = vmatpush1.msra.mxu0 0.0
  %4705 = vmatprep.subr.mxu0 0.0
  %4706 = vmatpush1.msra.mxu0 0.0
  %4707 = vmatprep.subr.mxu0 0.0
  %4708 = vmatpush1.msra.mxu0 0.0
  %4709 = vmatprep.subr.mxu0 0.0
  %4710 = vmatpush1.msra.mxu0 0.0
  %4711 = vmatprep.subr.mxu0 0.0
  %4712 = vmatpush1.msra.mxu0 0.0
  %4713 = vmatprep.subr.mxu0 0.0
  %4714 = vmatpush1.msra.mxu0 0.0
  %4715 = vmatprep.subr.mxu0 0.0
  %4716 = vmatpush1.msra.mxu0 0.0
  %4717 = vmatprep.subr.mxu0 0.0
  %4718 = vmatpush1.msra.mxu0 0.0
  %4719 = vmatprep.subr.mxu0 0.0
  %4720 = vmatpush1.msra.mxu0 0.0
  %4721 = vmatprep.subr.mxu0 0.0
  %4722 = vmatpush1.msra.mxu0 0.0
  %4723 = vmatprep.mubr.f32.mxu0 0.0
  %4724 = vmatmul.mubr.f32.gmra.mrb[0].mxu0 %v4465
  %v4725 = vpop.f32.mrb[0].mxu0
  %v4726 = vadd.f32 0.0, %v4725
  %v4727 = vpop.f32.mrb[0].mxu0
  %4728 = vmatprep.mubr.f32.mxu0 0.0
  %4729 = vmatmul.mubr.f32.gmra.mrb[0].mxu0 %v4468
  %v4730 = vpop.f32.mrb[0].mxu0
  %v4731 = vadd.f32 0.0, %v4730
  %v4732 = vpop.f32.mrb[0].mxu0
  %4733 = vmatprep.mubr.f32.mxu0 0.0
  %4734 = vmatmul.mubr.f32.gmra.mrb[0].mxu0 %v4471
  %v4735 = vpop.f32.mrb[0].mxu0
  %v4736 = vadd.f32 0.0, %v4735
  %v4737 = vpop.f32.mrb[0].mxu0
  %4738 = vmatprep.mubr.f32.mxu0 0.0
  %4739 = vmatmul.mubr.f32.gmra.mrb[0].mxu0 %v4474
  %v4740 = vpop.f32.mrb[0].mxu0
  %v4741 = vadd.f32 0.0, %v4740
  %v4742 = vpop.f32.mrb[0].mxu0
  %4743 = vmatprep.mubr.f32.mxu0 0.0
  %4744 = vmatmul.mubr.f32.gmra.mrb[0].mxu0 %v4477
  %v4745 = vpop.f32.mrb[0].mxu0
  %v4746 = vadd.f32 0.0, %v4745
  %v4747 = vpop.f32.mrb[0].mxu0
  %4748 = vmatprep.mubr.f32.mxu0 0.0
  %4749 = vmatmul.mubr.f32.gmra.mrb[0].mxu0 %v4480
  %v4750 = vpop.f32.mrb[0].mxu0
  %v4751 = vadd.f32 0.0, %v4750
  %v4752 = vpop.f32.mrb[0].mxu0
  %4753 = vmatprep.mubr.f32.mxu0 0.0
  %4754 = vmatmul.mubr.f32.gmra.mrb[0].mxu0 %v4483
  %v4755 = vpop.f32.mrb[0].mxu0
  %v4756 = vadd.f32 0.0, %v4755
  %v4757 = vpop.f32.mrb[0].mxu0
  %4758 = vmatprep.mubr.f32.mxu0 0.0
  %4759 = vmatmul.mubr.f32.gmra.mrb[0].mxu0 %v4486
  %v4760 = vpop.f32.mrb[0].mxu0
  %v4761 = vadd.f32 0.0, %v4760
  %v4762 = vpop.f32.mrb[0].mxu0
  %4763 = vmatprep.mubr.f32.mxu0 0.0
  %4764 = vmatmul.mubr.f32.gmra.mrb[0].mxu0 %v4489
  %v4765 = vpop.f32.mrb[0].mxu0
  %v4766 = vadd.f32 0.0, %v4765
  %v4767 = vpop.f32.mrb[0].mxu0
  %4768 = vmatprep.mubr.f32.mxu0 0.0
  %4769 = vmatmul.mubr.f32.gmra.mrb[0].mxu0 %v4492
  %v4770 = vpop.f32.mrb[0].mxu0
  %v4771 = vadd.f32 0.0, %v4770
  %v4772 = vpop.f32.mrb[0].mxu0
  %4773 = vmatprep.mubr.f32.mxu0 0.0
  %4774 = vmatmul.mubr.f32.gmra.mrb[0].mxu0 %v4495
  %v4775 = vpop.f32.mrb[0].mxu0
  %v4776 = vadd.f32 0.0, %v4775
  %v4777 = vpop.f32.mrb[0].mxu0
  %4778 = vmatprep.mubr.f32.mxu0 0.0
  %4779 = vmatmul.mubr.f32.gmra.mrb[0].mxu0 %v4498
  %v4780 = vpop.f32.mrb[0].mxu0
  %v4781 = vadd.f32 0.0, %v4780
  %v4782 = vpop.f32.mrb[0].mxu0
  %4783 = vmatprep.mubr.f32.mxu0 0.0
  %4784 = vmatmul.mubr.f32.gmra.mrb[0].mxu0 %v4501
  %v4785 = vpop.f32.mrb[0].mxu0
  %v4786 = vadd.f32 0.0, %v4785
  %v4787 = vpop.f32.mrb[0].mxu0
  %4788 = vmatprep.mubr.f32.mxu0 0.0
  %4789 = vmatmul.mubr.f32.gmra.mrb[0].mxu0 %v4504
  %v4790 = vpop.f32.mrb[0].mxu0
  %v4791 = vadd.f32 0.0, %v4790
  %v4792 = vpop.f32.mrb[0].mxu0
  %4793 = vmatprep.mubr.f32.mxu0 0.0
  %4794 = vmatmul.mubr.f32.gmra.mrb[0].mxu0 %v4507
  %v4795 = vpop.f32.mrb[0].mxu0
  %v4796 = vadd.f32 0.0, %v4795
  %v4797 = vpop.f32.mrb[0].mxu0
  %4798 = vmatprep.mubr.f32.mxu0 0.0
  %4799 = vmatmul.mubr.f32.gmra.mrb[0].mxu0 %v4510
  %v4800 = vpop.f32.mrb[0].mxu0
  %v4801 = vadd.f32 0.0, %v4800
  %v4802 = vpop.f32.mrb[0].mxu0
  %4803 = vmatprep.mubr.f32.mxu0 0.0
  %4804 = vmatmul.mubr.f32.gmra.mrb[0].mxu0 %v4513
  %v4805 = vpop.f32.mrb[0].mxu0
  %v4806 = vadd.f32 0.0, %v4805
  %v4807 = vpop.f32.mrb[0].mxu0
  %4808 = vmatprep.mubr.f32.mxu0 0.0
  %4809 = vmatmul.mubr.f32.gmra.mrb[0].mxu0 %v4516
  %v4810 = vpop.f32.mrb[0].mxu0
  %v4811 = vadd.f32 0.0, %v4810
  %v4812 = vpop.f32.mrb[0].mxu0
  %4813 = vmatprep.mubr.f32.mxu0 0.0
  %4814 = vmatmul.mubr.f32.gmra.mrb[0].mxu0 %v4519
  %v4815 = vpop.f32.mrb[0].mxu0
  %v4816 = vadd.f32 0.0, %v4815
  %v4817 = vpop.f32.mrb[0].mxu0
  %4818 = vmatprep.mubr.f32.mxu0 0.0
  %4819 = vmatmul.mubr.f32.gmra.mrb[0].mxu0 %v4522
  %v4820 = vpop.f32.mrb[0].mxu0
  %v4821 = vadd.f32 0.0, %v4820
  %v4822 = vpop.f32.mrb[0].mxu0
  %4823 = vmatprep.mubr.f32.mxu0 0.0
  %4824 = vmatmul.mubr.f32.gmra.mrb[0].mxu0 %v4525
  %v4825 = vpop.f32.mrb[0].mxu0
  %v4826 = vadd.f32 0.0, %v4825
  %v4827 = vpop.f32.mrb[0].mxu0
  %4828 = vmatprep.mubr.f32.mxu0 0.0
  %4829 = vmatmul.mubr.f32.gmra.mrb[0].mxu0 %v4528
  %v4830 = vpop.f32.mrb[0].mxu0
  %v4831 = vadd.f32 0.0, %v4830
  %v4832 = vpop.f32.mrb[0].mxu0
  %4833 = vmatprep.mubr.f32.mxu0 0.0
  %4834 = vmatmul.mubr.f32.gmra.mrb[0].mxu0 %v4531
  %v4835 = vpop.f32.mrb[0].mxu0
  %v4836 = vadd.f32 0.0, %v4835
  %v4837 = vpop.f32.mrb[0].mxu0
  %4838 = vmatprep.mubr.f32.mxu0 0.0
  %4839 = vmatmul.mubr.f32.gmra.mrb[0].mxu0 %v4534
  %v4840 = vpop.f32.mrb[0].mxu0
  %v4841 = vadd.f32 0.0, %v4840
  %v4842 = vpop.f32.mrb[0].mxu0
  %4843 = vmatprep.mubr.f32.mxu0 0.0
  %4844 = vmatmul.mubr.f32.gmra.mrb[0].mxu0 %v4537
  %v4845 = vpop.f32.mrb[0].mxu0
  %v4846 = vadd.f32 0.0, %v4845
  %v4847 = vpop.f32.mrb[0].mxu0
  %4848 = vmatprep.mubr.f32.mxu0 0.0
  %4849 = vmatmul.mubr.f32.gmra.mrb[0].mxu0 %v4540
  %v4850 = vpop.f32.mrb[0].mxu0
  %v4851 = vadd.f32 0.0, %v4850
  %v4852 = vpop.f32.mrb[0].mxu0
  %4853 = vmatprep.mubr.f32.mxu0 0.0
  %4854 = vmatmul.mubr.f32.gmra.mrb[0].mxu0 %v4543
  %v4855 = vpop.f32.mrb[0].mxu0
  %v4856 = vadd.f32 0.0, %v4855
  %v4857 = vpop.f32.mrb[0].mxu0
  %4858 = vmatprep.mubr.f32.mxu0 0.0
  %4859 = vmatmul.mubr.f32.gmra.mrb[0].mxu0 %v4546
  %v4860 = vpop.f32.mrb[0].mxu0
  %v4861 = vadd.f32 0.0, %v4860
  %v4862 = vpop.f32.mrb[0].mxu0
  %4863 = vmatprep.mubr.f32.mxu0 0.0
  %4864 = vmatmul.mubr.f32.gmra.mrb[0].mxu0 %v4549
  %v4865 = vpop.f32.mrb[0].mxu0
  %v4866 = vadd.f32 0.0, %v4865
  %v4867 = vpop.f32.mrb[0].mxu0
  %4868 = vmatprep.mubr.f32.mxu0 0.0
  %4869 = vmatmul.mubr.f32.gmra.mrb[0].mxu0 %v4552
  %v4870 = vpop.f32.mrb[0].mxu0
  %v4871 = vadd.f32 0.0, %v4870
  %v4872 = vpop.f32.mrb[0].mxu0
  %4873 = vmatprep.mubr.f32.mxu0 0.0
  %4874 = vmatmul.mubr.f32.gmra.mrb[0].mxu0 %v4555
  %v4875 = vpop.f32.mrb[0].mxu0
  %v4876 = vadd.f32 0.0, %v4875
  %v4877 = vpop.f32.mrb[0].mxu0
  %4878 = vmatprep.mubr.f32.mxu0 0.0
  %4879 = vmatmul.mubr.f32.gmra.mrb[0].mxu0 %v4558
  %v4880 = vpop.f32.mrb[0].mxu0
  %v4881 = vadd.f32 0.0, %v4880
  %v4882 = vpop.f32.mrb[0].mxu0
  %4883 = vmatprep.mubr.f32.mxu0 0.0
  %4884 = vmatmul.mubr.f32.gmra.mrb[0].mxu0 %v4561
  %v4885 = vpop.f32.mrb[0].mxu0
  %v4886 = vadd.f32 0.0, %v4885
  %v4887 = vpop.f32.mrb[0].mxu0
  %4888 = vmatprep.mubr.f32.mxu0 0.0
  %4889 = vmatmul.mubr.f32.gmra.mrb[0].mxu0 %v4564
  %v4890 = vpop.f32.mrb[0].mxu0
  %v4891 = vadd.f32 0.0, %v4890
  %v4892 = vpop.f32.mrb[0].mxu0
  %4893 = vmatprep.mubr.f32.mxu0 0.0
  %4894 = vmatmul.mubr.f32.gmra.mrb[0].mxu0 %v4567
  %v4895 = vpop.f32.mrb[0].mxu0
  %v4896 = vadd.f32 0.0, %v4895
  %v4897 = vpop.f32.mrb[0].mxu0
  %4898 = vmatprep.mubr.f32.mxu0 0.0
  %4899 = vmatmul.mubr.f32.gmra.mrb[0].mxu0 %v4570
  %v4900 = vpop.f32.mrb[0].mxu0
  %v4901 = vadd.f32 0.0, %v4900
  %v4902 = vpop.f32.mrb[0].mxu0
  %4903 = vmatprep.mubr.f32.mxu0 0.0
  %4904 = vmatmul.mubr.f32.gmra.mrb[0].mxu0 %v4573
  %v4905 = vpop.f32.mrb[0].mxu0
  %v4906 = vadd.f32 0.0, %v4905
  %v4907 = vpop.f32.mrb[0].mxu0
  %4908 = vmatprep.mubr.f32.mxu0 0.0
  %4909 = vmatmul.mubr.f32.gmra.mrb[0].mxu0 %v4576
  %v4910 = vpop.f32.mrb[0].mxu0
  %v4911 = vadd.f32 0.0, %v4910
  %v4912 = vpop.f32.mrb[0].mxu0
  %4913 = vmatprep.mubr.f32.mxu0 0.0
  %4914 = vmatmul.mubr.f32.gmra.mrb[0].mxu0 %v4579
  %v4915 = vpop.f32.mrb[0].mxu0
  %v4916 = vadd.f32 0.0, %v4915
  %v4917 = vpop.f32.mrb[0].mxu0
  %4918 = vmatprep.mubr.f32.mxu0 0.0
  %4919 = vmatmul.mubr.f32.gmra.mrb[0].mxu0 %v4582
  %v4920 = vpop.f32.mrb[0].mxu0
  %v4921 = vadd.f32 0.0, %v4920
  %v4922 = vpop.f32.mrb[0].mxu0
  %4923 = vmatprep.mubr.f32.mxu0 0.0
  %4924 = vmatmul.mubr.f32.gmra.mrb[0].mxu0 %v4585
  %v4925 = vpop.f32.mrb[0].mxu0
  %v4926 = vadd.f32 0.0, %v4925
  %v4927 = vpop.f32.mrb[0].mxu0
  %4928 = vmatprep.mubr.f32.mxu0 0.0
  %4929 = vmatmul.mubr.f32.gmra.mrb[0].mxu0 %v4588
  %v4930 = vpop.f32.mrb[0].mxu0
  %v4931 = vadd.f32 0.0, %v4930
  %v4932 = vpop.f32.mrb[0].mxu0
  %4933 = vmatprep.mubr.f32.mxu0 0.0
  %4934 = vmatmul.mubr.f32.gmra.mrb[0].mxu0 %v4591
  %v4935 = vpop.f32.mrb[0].mxu0
  %v4936 = vadd.f32 0.0, %v4935
  %v4937 = vpop.f32.mrb[0].mxu0
  %4938 = vmatprep.mubr.f32.mxu0 0.0
  %4939 = vmatmul.mubr.f32.gmra.mrb[0].mxu0 %v4594
  %v4940 = vpop.f32.mrb[0].mxu0
  %v4941 = vadd.f32 0.0, %v4940
  %v4942 = vpop.f32.mrb[0].mxu0
  %4943 = vmatprep.mubr.f32.mxu0 0.0
  %4944 = vmatmul.mubr.f32.gmra.mrb[0].mxu0 %v4597
  %v4945 = vpop.f32.mrb[0].mxu0
  %v4946 = vadd.f32 0.0, %v4945
  %v4947 = vpop.f32.mrb[0].mxu0
  %4948 = vmatprep.mubr.f32.mxu0 0.0
  %4949 = vmatmul.mubr.f32.gmra.mrb[0].mxu0 %v4600
  %v4950 = vpop.f32.mrb[0].mxu0
  %v4951 = vadd.f32 0.0, %v4950
  %v4952 = vpop.f32.mrb[0].mxu0
  %4953 = vmatprep.mubr.f32.mxu0 0.0
  %4954 = vmatmul.mubr.f32.gmra.mrb[0].mxu0 %v4603
  %v4955 = vpop.f32.mrb[0].mxu0
  %v4956 = vadd.f32 0.0, %v4955
  %v4957 = vpop.f32.mrb[0].mxu0
  %4958 = vmatprep.mubr.f32.mxu0 0.0
  %4959 = vmatmul.mubr.f32.gmra.mrb[0].mxu0 %v4606
  %v4960 = vpop.f32.mrb[0].mxu0
  %v4961 = vadd.f32 0.0, %v4960
  %v4962 = vpop.f32.mrb[0].mxu0
  %4963 = vmatprep.mubr.f32.mxu0 0.0
  %4964 = vmatmul.mubr.f32.gmra.mrb[0].mxu0 %v4609
  %v4965 = vpop.f32.mrb[0].mxu0
  %v4966 = vadd.f32 0.0, %v4965
  %v4967 = vpop.f32.mrb[0].mxu0
  %4968 = vmatprep.mubr.f32.mxu0 0.0
  %4969 = vmatmul.mubr.f32.gmra.mrb[0].mxu0 %v4612
  %v4970 = vpop.f32.mrb[0].mxu0
  %v4971 = vadd.f32 0.0, %v4970
  %v4972 = vpop.f32.mrb[0].mxu0
  %4973 = vmatprep.mubr.f32.mxu0 0.0
  %4974 = vmatmul.mubr.f32.gmra.mrb[0].mxu0 %v4615
  %v4975 = vpop.f32.mrb[0].mxu0
  %v4976 = vadd.f32 0.0, %v4975
  %v4977 = vpop.f32.mrb[0].mxu0
  %4978 = vmatprep.mubr.f32.mxu0 0.0
  %4979 = vmatmul.mubr.f32.gmra.mrb[0].mxu0 %v4618
  %v4980 = vpop.f32.mrb[0].mxu0
  %v4981 = vadd.f32 0.0, %v4980
  %v4982 = vpop.f32.mrb[0].mxu0
  %4983 = vmatprep.mubr.f32.mxu0 0.0
  %4984 = vmatmul.mubr.f32.gmra.mrb[0].mxu0 %v4621
  %v4985 = vpop.f32.mrb[0].mxu0
  %v4986 = vadd.f32 0.0, %v4985
  %v4987 = vpop.f32.mrb[0].mxu0
  %4988 = vmatprep.mubr.f32.mxu0 0.0
  %4989 = vmatmul.mubr.f32.gmra.mrb[0].mxu0 %v4624
  %v4990 = vpop.f32.mrb[0].mxu0
  %v4991 = vadd.f32 0.0, %v4990
  %v4992 = vpop.f32.mrb[0].mxu0
  %4993 = vmatprep.mubr.f32.mxu0 0.0
  %4994 = vmatmul.mubr.f32.gmra.mrb[0].mxu0 %v4627
  %v4995 = vpop.f32.mrb[0].mxu0
  %v4996 = vadd.f32 0.0, %v4995
  %v4997 = vpop.f32.mrb[0].mxu0
  %4998 = vmatprep.mubr.f32.mxu0 0.0
  %4999 = vmatmul.mubr.f32.gmra.mrb[0].mxu0 %v4630
  %v5000 = vpop.f32.mrb[0].mxu0
  %v5001 = vadd.f32 0.0, %v5000
  %v5002 = vpop.f32.mrb[0].mxu0
  %5003 = vmatprep.mubr.f32.mxu0 0.0
  %5004 = vmatmul.mubr.f32.gmra.mrb[0].mxu0 %v4633
  %v5005 = vpop.f32.mrb[0].mxu0
  %v5006 = vadd.f32 0.0, %v5005
  %v5007 = vpop.f32.mrb[0].mxu0
  %5008 = vmatprep.mubr.f32.mxu0 0.0
  %5009 = vmatmul.mubr.f32.gmra.mrb[0].mxu0 %v4636
  %v5010 = vpop.f32.mrb[0].mxu0
  %v5011 = vadd.f32 0.0, %v5010
  %v5012 = vpop.f32.mrb[0].mxu0
  %5013 = vmatprep.mubr.f32.mxu0 0.0
  %5014 = vmatmul.mubr.f32.gmra.mrb[0].mxu0 %v4639
  %v5015 = vpop.f32.mrb[0].mxu0
  %v5016 = vadd.f32 0.0, %v5015
  %v5017 = vpop.f32.mrb[0].mxu0
  %5018 = vmatprep.mubr.f32.mxu0 0.0
  %5019 = vmatmul.mubr.f32.gmra.mrb[0].mxu0 %v4642
  %v5020 = vpop.f32.mrb[0].mxu0
  %v5021 = vadd.f32 0.0, %v5020
  %v5022 = vpop.f32.mrb[0].mxu0
  %5023 = vmatprep.mubr.f32.mxu0 0.0
  %5024 = vmatmul.mubr.f32.gmra.mrb[0].mxu0 %v4645
  %v5025 = vpop.f32.mrb[0].mxu0
  %v5026 = vadd.f32 0.0, %v5025
  %v5027 = vpop.f32.mrb[0].mxu0
  %5028 = vmatprep.mubr.f32.mxu0 0.0
  %5029 = vmatmul.mubr.f32.gmra.mrb[0].mxu0 %v4648
  %v5030 = vpop.f32.mrb[0].mxu0
  %v5031 = vadd.f32 0.0, %v5030
  %v5032 = vpop.f32.mrb[0].mxu0
  %5033 = vmatprep.mubr.f32.mxu0 0.0
  %5034 = vmatmul.mubr.f32.gmra.mrb[0].mxu0 %v4651
  %v5035 = vpop.f32.mrb[0].mxu0
  %v5036 = vadd.f32 0.0, %v5035
  %v5037 = vpop.f32.mrb[0].mxu0
  %5038 = vmatprep.mubr.f32.mxu0 0.0
  %5039 = vmatmul.mubr.f32.gmra.mrb[0].mxu0 %v4654
  %v5040 = vpop.f32.mrb[0].mxu0
  %v5041 = vadd.f32 0.0, %v5040
  %v5042 = vpop.f32.mrb[0].mxu0
  %5043 = vdwg.mxu0
  %v5044 = vadd.f32 %v4333, %v4726
  %v5045 = vadd.f32 %v4334, %v4731
  %v5046 = vadd.f32 %v4335, %v4736
  %v5047 = vadd.f32 %v4336, %v4741
  %v5048 = vadd.f32 %v4337, %v4746
  %v5049 = vadd.f32 %v4338, %v4751
  %v5050 = vadd.f32 %v4339, %v4756
  %v5051 = vadd.f32 %v4340, %v4761
  %v5052 = vadd.f32 %v4341, %v4766
  %v5053 = vadd.f32 %v4342, %v4771
  %v5054 = vadd.f32 %v4343, %v4776
  %v5055 = vadd.f32 %v4344, %v4781
  %v5056 = vadd.f32 %v4345, %v4786
  %v5057 = vadd.f32 %v4346, %v4791
  %v5058 = vadd.f32 %v4347, %v4796
  %v5059 = vadd.f32 %v4348, %v4801
  %v5060 = vadd.f32 %v4349, %v4806
  %v5061 = vadd.f32 %v4350, %v4811
  %v5062 = vadd.f32 %v4351, %v4816
  %v5063 = vadd.f32 %v4352, %v4821
  %v5064 = vadd.f32 %v4353, %v4826
  %v5065 = vadd.f32 %v4354, %v4831
  %v5066 = vadd.f32 %v4355, %v4836
  %v5067 = vadd.f32 %v4356, %v4841
  %v5068 = vadd.f32 %v4357, %v4846
  %v5069 = vadd.f32 %v4358, %v4851
  %v5070 = vadd.f32 %v4359, %v4856
  %v5071 = vadd.f32 %v4360, %v4861
  %v5072 = vadd.f32 %v4361, %v4866
  %v5073 = vadd.f32 %v4362, %v4871
  %v5074 = vadd.f32 %v4363, %v4876
  %v5075 = vadd.f32 %v4364, %v4881
  %v5076 = vadd.f32 %v4365, %v4886
  %v5077 = vadd.f32 %v4366, %v4891
  %v5078 = vadd.f32 %v4367, %v4896
  %v5079 = vadd.f32 %v4368, %v4901
  %v5080 = vadd.f32 %v4369, %v4906
  %v5081 = vadd.f32 %v4370, %v4911
  %v5082 = vadd.f32 %v4371, %v4916
  %v5083 = vadd.f32 %v4372, %v4921
  %v5084 = vadd.f32 %v4373, %v4926
  %v5085 = vadd.f32 %v4374, %v4931
  %v5086 = vadd.f32 %v4375, %v4936
  %v5087 = vadd.f32 %v4376, %v4941
  %v5088 = vadd.f32 %v4377, %v4946
  %v5089 = vadd.f32 %v4378, %v4951
  %v5090 = vadd.f32 %v4379, %v4956
  %v5091 = vadd.f32 %v4380, %v4961
  %v5092 = vadd.f32 %v4381, %v4966
  %v5093 = vadd.f32 %v4382, %v4971
  %v5094 = vadd.f32 %v4383, %v4976
  %v5095 = vadd.f32 %v4384, %v4981
  %v5096 = vadd.f32 %v4385, %v4986
  %v5097 = vadd.f32 %v4386, %v4991
  %v5098 = vadd.f32 %v4387, %v4996
  %v5099 = vadd.f32 %v4388, %v5001
  %v5100 = vadd.f32 %v4389, %v5006
  %v5101 = vadd.f32 %v4390, %v5011
  %v5102 = vadd.f32 %v4391, %v5016
  %v5103 = vadd.f32 %v4392, %v5021
  %v5104 = vadd.f32 %v4393, %v5026
  %v5105 = vadd.f32 %v4394, %v5031
  %v5106 = vadd.f32 %v4395, %v5036
  %v5107 = vadd.f32 %v4396, %v5041
  %v5108 = vld [vmem:[%s4397 + $0x1] sm:$0xff]
  %v5109 = vld [vmem:[%s4397 + $0x9] sm:$0xff]
  %v5110 = vld [vmem:[%s4397 + $0x19] sm:$0xff]
  %v5111 = vld [vmem:[%s4397 + $0x21] sm:$0xff]
  %v5112 = vld [vmem:[%s4397 + $0x31] sm:$0xff]
  %v5113 = vld [vmem:[%s4397 + $0x39] sm:$0xff]
  %v5114 = vld [vmem:[%s4397 + $0x49] sm:$0xff]
  %v5115 = vld [vmem:[%s4397 + $0x51] sm:$0xff]
  %v5116 = vld [vmem:[%s4397 + $0x61] sm:$0xff]
  %v5117 = vld [vmem:[%s4397 + $0x69] sm:$0xff]
  %v5118 = vld [vmem:[%s4397 + $0x79] sm:$0xff]
  %v5119 = vld [vmem:[%s4397 + $0x81] sm:$0xff]
  %v5120 = vld [vmem:[%s4397 + $0x91] sm:$0xff]
  %v5121 = vld [vmem:[%s4397 + $0x99] sm:$0xff]
  %v5122 = vld [vmem:[%s4397 + $0xa9] sm:$0xff]
  %v5123 = vld [vmem:[%s4397 + $0xb1] sm:$0xff]
  %v5124 = vld [vmem:[%s4397 + $0xc1] sm:$0xff]
  %v5125 = vld [vmem:[%s4397 + $0xc9] sm:$0xff]
  %v5126 = vld [vmem:[%s4397 + $0xd9] sm:$0xff]
  %v5127 = vld [vmem:[%s4397 + $0xe1] sm:$0xff]
  %v5128 = vld [vmem:[%s4397 + $0xf1] sm:$0xff]
  %v5129 = vld [vmem:[%s4397 + $0xf9] sm:$0xff]
  %v5130 = vld [vmem:[%s4397 + $0x109] sm:$0xff]
  %v5131 = vld [vmem:[%s4397 + $0x111] sm:$0xff]
  %v5132 = vld [vmem:[%s4397 + $0x121] sm:$0xff]
  %v5133 = vld [vmem:[%s4397 + $0x129] sm:$0xff]
  %v5134 = vld [vmem:[%s4397 + $0x139] sm:$0xff]
  %v5135 = vld [vmem:[%s4397 + $0x141] sm:$0xff]
  %v5136 = vld [vmem:[%s4397 + $0x151] sm:$0xff]
  %v5137 = vld [vmem:[%s4397 + $0x159] sm:$0xff]
  %v5138 = vld [vmem:[%s4397 + $0x169] sm:$0xff]
  %v5139 = vld [vmem:[%s4397 + $0x171] sm:$0xff]
  %v5140 = vld [vmem:[%s4397 + $0x1b1] sm:$0xff]
  %v5141 = vld [vmem:[%s4397 + $0x1b9] sm:$0xff]
  %v5142 = vld [vmem:[%s4397 + $0x1c9] sm:$0xff]
  %v5143 = vld [vmem:[%s4397 + $0x1d1] sm:$0xff]
  %v5144 = vld [vmem:[%s4397 + $0x1e1] sm:$0xff]
  %v5145 = vld [vmem:[%s4397 + $0x1e9] sm:$0xff]
  %v5146 = vld [vmem:[%s4397 + $0x1f9] sm:$0xff]
  %v5147 = vld [vmem:[%s4397 + $0x201] sm:$0xff]
  %v5148 = vld [vmem:[%s4397 + $0x211] sm:$0xff]
  %v5149 = vld [vmem:[%s4397 + $0x219] sm:$0xff]
  %v5150 = vld [vmem:[%s4397 + $0x229] sm:$0xff]
  %v5151 = vld [vmem:[%s4397 + $0x231] sm:$0xff]
  %v5152 = vld [vmem:[%s4397 + $0x241] sm:$0xff]
  %v5153 = vld [vmem:[%s4397 + $0x249] sm:$0xff]
  %v5154 = vld [vmem:[%s4397 + $0x259] sm:$0xff]
  %v5155 = vld [vmem:[%s4397 + $0x261] sm:$0xff]
  %v5156 = vld [vmem:[%s4397 + $0x271] sm:$0xff]
  %v5157 = vld [vmem:[%s4397 + $0x279] sm:$0xff]
  %v5158 = vld [vmem:[%s4397 + $0x289] sm:$0xff]
  %v5159 = vld [vmem:[%s4397 + $0x291] sm:$0xff]
  %v5160 = vld [vmem:[%s4397 + $0x2a1] sm:$0xff]
  %v5161 = vld [vmem:[%s4397 + $0x2a9] sm:$0xff]
  %v5162 = vld [vmem:[%s4397 + $0x2b9] sm:$0xff]
  %v5163 = vld [vmem:[%s4397 + $0x2c1] sm:$0xff]
  %v5164 = vld [vmem:[%s4397 + $0x2d1] sm:$0xff]
  %v5165 = vld [vmem:[%s4397 + $0x2d9] sm:$0xff]
  %v5166 = vld [vmem:[%s4397 + $0x2e9] sm:$0xff]
  %v5167 = vld [vmem:[%s4397 + $0x2f1] sm:$0xff]
  %v5168 = vld [vmem:[%s4397 + $0x301] sm:$0xff]
  %v5169 = vld [vmem:[%s4397 + $0x309] sm:$0xff]
  %v5170 = vld [vmem:[%s4397 + $0x319] sm:$0xff]
  %v5171 = vld [vmem:[%s4397 + $0x321] sm:$0xff]
  %s5172 = scalar_lea.vmem %s1, 28
  %v5173 = vld [vmem:[%s5172] sm:$0xf]
  %v5175 = vsel %vm26, %v5108, 0
  %v5178 = vsel %vm26, %v5109, 0
  %v5181 = vsel %vm26, %v5110, 0
  %v5184 = vsel %vm26, %v5111, 0
  %v5187 = vsel %vm26, %v5112, 0
  %v5190 = vsel %vm26, %v5113, 0
  %v5193 = vsel %vm26, %v5114, 0
  %v5196 = vsel %vm26, %v5115, 0
  %v5199 = vsel %vm26, %v5116, 0
  %v5202 = vsel %vm26, %v5117, 0
  %v5205 = vsel %vm26, %v5118, 0
  %v5208 = vsel %vm26, %v5119, 0
  %v5211 = vsel %vm26, %v5120, 0
  %v5214 = vsel %vm26, %v5121, 0
  %v5217 = vsel %vm26, %v5122, 0
  %v5220 = vsel %vm26, %v5123, 0
  %v5223 = vsel %vm26, %v5124, 0
  %v5226 = vsel %vm26, %v5125, 0
  %v5229 = vsel %vm26, %v5126, 0
  %v5232 = vsel %vm26, %v5127, 0
  %v5235 = vsel %vm26, %v5128, 0
  %v5238 = vsel %vm26, %v5129, 0
  %v5241 = vsel %vm26, %v5130, 0
  %v5244 = vsel %vm26, %v5131, 0
  %v5247 = vsel %vm26, %v5132, 0
  %v5250 = vsel %vm26, %v5133, 0
  %v5253 = vsel %vm26, %v5134, 0
  %v5256 = vsel %vm26, %v5135, 0
  %v5259 = vsel %vm26, %v5136, 0
  %v5262 = vsel %vm26, %v5137, 0
  %v5265 = vsel %vm26, %v5138, 0
  %v5268 = vsel %vm26, %v5139, 0
  %v5271 = vsel %vm26, %v5140, 0
  %v5274 = vsel %vm26, %v5141, 0
  %v5277 = vsel %vm26, %v5142, 0
  %v5280 = vsel %vm26, %v5143, 0
  %v5283 = vsel %vm26, %v5144, 0
  %v5286 = vsel %vm26, %v5145, 0
  %v5289 = vsel %vm26, %v5146, 0
  %v5292 = vsel %vm26, %v5147, 0
  %v5295 = vsel %vm26, %v5148, 0
  %v5298 = vsel %vm26, %v5149, 0
  %v5301 = vsel %vm26, %v5150, 0
  %v5304 = vsel %vm26, %v5151, 0
  %v5307 = vsel %vm26, %v5152, 0
  %v5310 = vsel %vm26, %v5153, 0
  %v5313 = vsel %vm26, %v5154, 0
  %v5316 = vsel %vm26, %v5155, 0
  %v5319 = vsel %vm26, %v5156, 0
  %v5322 = vsel %vm26, %v5157, 0
  %v5325 = vsel %vm26, %v5158, 0
  %v5328 = vsel %vm26, %v5159, 0
  %v5331 = vsel %vm26, %v5160, 0
  %v5334 = vsel %vm26, %v5161, 0
  %v5337 = vsel %vm26, %v5162, 0
  %v5340 = vsel %vm26, %v5163, 0
  %v5343 = vsel %vm26, %v5164, 0
  %v5346 = vsel %vm26, %v5165, 0
  %v5349 = vsel %vm26, %v5166, 0
  %v5352 = vsel %vm26, %v5167, 0
  %v5355 = vsel %vm26, %v5168, 0
  %v5358 = vsel %vm26, %v5169, 0
  %v5361 = vsel %vm26, %v5170, 0
  %v5364 = vsel %vm26, %v5171, 0
  %v5367 = vsel %vm588, %v5173, 0
  %5369 = vmatprep.subr.mxu0 0.0
  %5370 = vmatpush1.msra.mxu0 %v5367
  %5371 = vmatprep.subr.mxu0 0.0
  %5372 = vmatpush1.msra.mxu0 0.0
  %5373 = vmatprep.subr.mxu0 0.0
  %5374 = vmatpush1.msra.mxu0 0.0
  %5375 = vmatprep.subr.mxu0 0.0
  %5376 = vmatpush1.msra.mxu0 0.0
  %5377 = vmatprep.subr.mxu0 0.0
  %5378 = vmatpush1.msra.mxu0 0.0
  %5379 = vmatprep.subr.mxu0 0.0
  %5380 = vmatpush1.msra.mxu0 0.0
  %5381 = vmatprep.subr.mxu0 0.0
  %5382 = vmatpush1.msra.mxu0 0.0
  %5383 = vmatprep.subr.mxu0 0.0
  %5384 = vmatpush1.msra.mxu0 0.0
  %5385 = vmatprep.subr.mxu0 0.0
  %5386 = vmatpush1.msra.mxu0 0.0
  %5387 = vmatprep.subr.mxu0 0.0
  %5388 = vmatpush1.msra.mxu0 0.0
  %5389 = vmatprep.subr.mxu0 0.0
  %5390 = vmatpush1.msra.mxu0 0.0
  %5391 = vmatprep.subr.mxu0 0.0
  %5392 = vmatpush1.msra.mxu0 0.0
  %5393 = vmatprep.subr.mxu0 0.0
  %5394 = vmatpush1.msra.mxu0 0.0
  %5395 = vmatprep.subr.mxu0 0.0
  %5396 = vmatpush1.msra.mxu0 0.0
  %5397 = vmatprep.subr.mxu0 0.0
  %5398 = vmatpush1.msra.mxu0 0.0
  %5399 = vmatprep.subr.mxu0 0.0
  %5400 = vmatpush1.msra.mxu0 0.0
  %5401 = vmatprep.subr.mxu0 0.0
  %5402 = vmatpush1.msra.mxu0 0.0
  %5403 = vmatprep.subr.mxu0 0.0
  %5404 = vmatpush1.msra.mxu0 0.0
  %5405 = vmatprep.subr.mxu0 0.0
  %5406 = vmatpush1.msra.mxu0 0.0
  %5407 = vmatprep.subr.mxu0 0.0
  %5408 = vmatpush1.msra.mxu0 0.0
  %5409 = vmatprep.subr.mxu0 0.0
  %5410 = vmatpush1.msra.mxu0 0.0
  %5411 = vmatprep.subr.mxu0 0.0
  %5412 = vmatpush1.msra.mxu0 0.0
  %5413 = vmatprep.subr.mxu0 0.0
  %5414 = vmatpush1.msra.mxu0 0.0
  %5415 = vmatprep.subr.mxu0 0.0
  %5416 = vmatpush1.msra.mxu0 0.0
  %5417 = vmatprep.subr.mxu0 0.0
  %5418 = vmatpush1.msra.mxu0 0.0
  %5419 = vmatprep.subr.mxu0 0.0
  %5420 = vmatpush1.msra.mxu0 0.0
  %5421 = vmatprep.subr.mxu0 0.0
  %5422 = vmatpush1.msra.mxu0 0.0
  %5423 = vmatprep.subr.mxu0 0.0
  %5424 = vmatpush1.msra.mxu0 0.0
  %5425 = vmatprep.subr.mxu0 0.0
  %5426 = vmatpush1.msra.mxu0 0.0
  %5427 = vmatprep.subr.mxu0 0.0
  %5428 = vmatpush1.msra.mxu0 0.0
  %5429 = vmatprep.subr.mxu0 0.0
  %5430 = vmatpush1.msra.mxu0 0.0
  %5431 = vmatprep.subr.mxu0 0.0
  %5432 = vmatpush1.msra.mxu0 0.0
  %5433 = vmatprep.mubr.f32.mxu0 0.0
  %5434 = vmatmul.mubr.f32.gmra.mrb[0].mxu0 %v5175
  %v5435 = vpop.f32.mrb[0].mxu0
  %v5436 = vadd.f32 0.0, %v5435
  %v5437 = vpop.f32.mrb[0].mxu0
  %5438 = vmatprep.mubr.f32.mxu0 0.0
  %5439 = vmatmul.mubr.f32.gmra.mrb[0].mxu0 %v5178
  %v5440 = vpop.f32.mrb[0].mxu0
  %v5441 = vadd.f32 0.0, %v5440
  %v5442 = vpop.f32.mrb[0].mxu0
  %5443 = vmatprep.mubr.f32.mxu0 0.0
  %5444 = vmatmul.mubr.f32.gmra.mrb[0].mxu0 %v5181
  %v5445 = vpop.f32.mrb[0].mxu0
  %v5446 = vadd.f32 0.0, %v5445
  %v5447 = vpop.f32.mrb[0].mxu0
  %5448 = vmatprep.mubr.f32.mxu0 0.0
  %5449 = vmatmul.mubr.f32.gmra.mrb[0].mxu0 %v5184
  %v5450 = vpop.f32.mrb[0].mxu0
  %v5451 = vadd.f32 0.0, %v5450
  %v5452 = vpop.f32.mrb[0].mxu0
  %5453 = vmatprep.mubr.f32.mxu0 0.0
  %5454 = vmatmul.mubr.f32.gmra.mrb[0].mxu0 %v5187
  %v5455 = vpop.f32.mrb[0].mxu0
  %v5456 = vadd.f32 0.0, %v5455
  %v5457 = vpop.f32.mrb[0].mxu0
  %5458 = vmatprep.mubr.f32.mxu0 0.0
  %5459 = vmatmul.mubr.f32.gmra.mrb[0].mxu0 %v5190
  %v5460 = vpop.f32.mrb[0].mxu0
  %v5461 = vadd.f32 0.0, %v5460
  %v5462 = vpop.f32.mrb[0].mxu0
  %5463 = vmatprep.mubr.f32.mxu0 0.0
  %5464 = vmatmul.mubr.f32.gmra.mrb[0].mxu0 %v5193
  %v5465 = vpop.f32.mrb[0].mxu0
  %v5466 = vadd.f32 0.0, %v5465
  %v5467 = vpop.f32.mrb[0].mxu0
  %5468 = vmatprep.mubr.f32.mxu0 0.0
  %5469 = vmatmul.mubr.f32.gmra.mrb[0].mxu0 %v5196
  %v5470 = vpop.f32.mrb[0].mxu0
  %v5471 = vadd.f32 0.0, %v5470
  %v5472 = vpop.f32.mrb[0].mxu0
  %5473 = vmatprep.mubr.f32.mxu0 0.0
  %5474 = vmatmul.mubr.f32.gmra.mrb[0].mxu0 %v5199
  %v5475 = vpop.f32.mrb[0].mxu0
  %v5476 = vadd.f32 0.0, %v5475
  %v5477 = vpop.f32.mrb[0].mxu0
  %5478 = vmatprep.mubr.f32.mxu0 0.0
  %5479 = vmatmul.mubr.f32.gmra.mrb[0].mxu0 %v5202
  %v5480 = vpop.f32.mrb[0].mxu0
  %v5481 = vadd.f32 0.0, %v5480
  %v5482 = vpop.f32.mrb[0].mxu0
  %5483 = vmatprep.mubr.f32.mxu0 0.0
  %5484 = vmatmul.mubr.f32.gmra.mrb[0].mxu0 %v5205
  %v5485 = vpop.f32.mrb[0].mxu0
  %v5486 = vadd.f32 0.0, %v5485
  %v5487 = vpop.f32.mrb[0].mxu0
  %5488 = vmatprep.mubr.f32.mxu0 0.0
  %5489 = vmatmul.mubr.f32.gmra.mrb[0].mxu0 %v5208
  %v5490 = vpop.f32.mrb[0].mxu0
  %v5491 = vadd.f32 0.0, %v5490
  %v5492 = vpop.f32.mrb[0].mxu0
  %5493 = vmatprep.mubr.f32.mxu0 0.0
  %5494 = vmatmul.mubr.f32.gmra.mrb[0].mxu0 %v5211
  %v5495 = vpop.f32.mrb[0].mxu0
  %v5496 = vadd.f32 0.0, %v5495
  %v5497 = vpop.f32.mrb[0].mxu0
  %5498 = vmatprep.mubr.f32.mxu0 0.0
  %5499 = vmatmul.mubr.f32.gmra.mrb[0].mxu0 %v5214
  %v5500 = vpop.f32.mrb[0].mxu0
  %v5501 = vadd.f32 0.0, %v5500
  %v5502 = vpop.f32.mrb[0].mxu0
  %5503 = vmatprep.mubr.f32.mxu0 0.0
  %5504 = vmatmul.mubr.f32.gmra.mrb[0].mxu0 %v5217
  %v5505 = vpop.f32.mrb[0].mxu0
  %v5506 = vadd.f32 0.0, %v5505
  %v5507 = vpop.f32.mrb[0].mxu0
  %5508 = vmatprep.mubr.f32.mxu0 0.0
  %5509 = vmatmul.mubr.f32.gmra.mrb[0].mxu0 %v5220
  %v5510 = vpop.f32.mrb[0].mxu0
  %v5511 = vadd.f32 0.0, %v5510
  %v5512 = vpop.f32.mrb[0].mxu0
  %5513 = vmatprep.mubr.f32.mxu0 0.0
  %5514 = vmatmul.mubr.f32.gmra.mrb[0].mxu0 %v5223
  %v5515 = vpop.f32.mrb[0].mxu0
  %v5516 = vadd.f32 0.0, %v5515
  %v5517 = vpop.f32.mrb[0].mxu0
  %5518 = vmatprep.mubr.f32.mxu0 0.0
  %5519 = vmatmul.mubr.f32.gmra.mrb[0].mxu0 %v5226
  %v5520 = vpop.f32.mrb[0].mxu0
  %v5521 = vadd.f32 0.0, %v5520
  %v5522 = vpop.f32.mrb[0].mxu0
  %5523 = vmatprep.mubr.f32.mxu0 0.0
  %5524 = vmatmul.mubr.f32.gmra.mrb[0].mxu0 %v5229
  %v5525 = vpop.f32.mrb[0].mxu0
  %v5526 = vadd.f32 0.0, %v5525
  %v5527 = vpop.f32.mrb[0].mxu0
  %5528 = vmatprep.mubr.f32.mxu0 0.0
  %5529 = vmatmul.mubr.f32.gmra.mrb[0].mxu0 %v5232
  %v5530 = vpop.f32.mrb[0].mxu0
  %v5531 = vadd.f32 0.0, %v5530
  %v5532 = vpop.f32.mrb[0].mxu0
  %5533 = vmatprep.mubr.f32.mxu0 0.0
  %5534 = vmatmul.mubr.f32.gmra.mrb[0].mxu0 %v5235
  %v5535 = vpop.f32.mrb[0].mxu0
  %v5536 = vadd.f32 0.0, %v5535
  %v5537 = vpop.f32.mrb[0].mxu0
  %5538 = vmatprep.mubr.f32.mxu0 0.0
  %5539 = vmatmul.mubr.f32.gmra.mrb[0].mxu0 %v5238
  %v5540 = vpop.f32.mrb[0].mxu0
  %v5541 = vadd.f32 0.0, %v5540
  %v5542 = vpop.f32.mrb[0].mxu0
  %5543 = vmatprep.mubr.f32.mxu0 0.0
  %5544 = vmatmul.mubr.f32.gmra.mrb[0].mxu0 %v5241
  %v5545 = vpop.f32.mrb[0].mxu0
  %v5546 = vadd.f32 0.0, %v5545
  %v5547 = vpop.f32.mrb[0].mxu0
  %5548 = vmatprep.mubr.f32.mxu0 0.0
  %5549 = vmatmul.mubr.f32.gmra.mrb[0].mxu0 %v5244
  %v5550 = vpop.f32.mrb[0].mxu0
  %v5551 = vadd.f32 0.0, %v5550
  %v5552 = vpop.f32.mrb[0].mxu0
  %5553 = vmatprep.mubr.f32.mxu0 0.0
  %5554 = vmatmul.mubr.f32.gmra.mrb[0].mxu0 %v5247
  %v5555 = vpop.f32.mrb[0].mxu0
  %v5556 = vadd.f32 0.0, %v5555
  %v5557 = vpop.f32.mrb[0].mxu0
  %5558 = vmatprep.mubr.f32.mxu0 0.0
  %5559 = vmatmul.mubr.f32.gmra.mrb[0].mxu0 %v5250
  %v5560 = vpop.f32.mrb[0].mxu0
  %v5561 = vadd.f32 0.0, %v5560
  %v5562 = vpop.f32.mrb[0].mxu0
  %5563 = vmatprep.mubr.f32.mxu0 0.0
  %5564 = vmatmul.mubr.f32.gmra.mrb[0].mxu0 %v5253
  %v5565 = vpop.f32.mrb[0].mxu0
  %v5566 = vadd.f32 0.0, %v5565
  %v5567 = vpop.f32.mrb[0].mxu0
  %5568 = vmatprep.mubr.f32.mxu0 0.0
  %5569 = vmatmul.mubr.f32.gmra.mrb[0].mxu0 %v5256
  %v5570 = vpop.f32.mrb[0].mxu0
  %v5571 = vadd.f32 0.0, %v5570
  %v5572 = vpop.f32.mrb[0].mxu0
  %5573 = vmatprep.mubr.f32.mxu0 0.0
  %5574 = vmatmul.mubr.f32.gmra.mrb[0].mxu0 %v5259
  %v5575 = vpop.f32.mrb[0].mxu0
  %v5576 = vadd.f32 0.0, %v5575
  %v5577 = vpop.f32.mrb[0].mxu0
  %5578 = vmatprep.mubr.f32.mxu0 0.0
  %5579 = vmatmul.mubr.f32.gmra.mrb[0].mxu0 %v5262
  %v5580 = vpop.f32.mrb[0].mxu0
  %v5581 = vadd.f32 0.0, %v5580
  %v5582 = vpop.f32.mrb[0].mxu0
  %5583 = vmatprep.mubr.f32.mxu0 0.0
  %5584 = vmatmul.mubr.f32.gmra.mrb[0].mxu0 %v5265
  %v5585 = vpop.f32.mrb[0].mxu0
  %v5586 = vadd.f32 0.0, %v5585
  %v5587 = vpop.f32.mrb[0].mxu0
  %5588 = vmatprep.mubr.f32.mxu0 0.0
  %5589 = vmatmul.mubr.f32.gmra.mrb[0].mxu0 %v5268
  %v5590 = vpop.f32.mrb[0].mxu0
  %v5591 = vadd.f32 0.0, %v5590
  %v5592 = vpop.f32.mrb[0].mxu0
  %5593 = vmatprep.mubr.f32.mxu0 0.0
  %5594 = vmatmul.mubr.f32.gmra.mrb[0].mxu0 %v5271
  %v5595 = vpop.f32.mrb[0].mxu0
  %v5596 = vadd.f32 0.0, %v5595
  %v5597 = vpop.f32.mrb[0].mxu0
  %5598 = vmatprep.mubr.f32.mxu0 0.0
  %5599 = vmatmul.mubr.f32.gmra.mrb[0].mxu0 %v5274
  %v5600 = vpop.f32.mrb[0].mxu0
  %v5601 = vadd.f32 0.0, %v5600
  %v5602 = vpop.f32.mrb[0].mxu0
  %5603 = vmatprep.mubr.f32.mxu0 0.0
  %5604 = vmatmul.mubr.f32.gmra.mrb[0].mxu0 %v5277
  %v5605 = vpop.f32.mrb[0].mxu0
  %v5606 = vadd.f32 0.0, %v5605
  %v5607 = vpop.f32.mrb[0].mxu0
  %5608 = vmatprep.mubr.f32.mxu0 0.0
  %5609 = vmatmul.mubr.f32.gmra.mrb[0].mxu0 %v5280
  %v5610 = vpop.f32.mrb[0].mxu0
  %v5611 = vadd.f32 0.0, %v5610
  %v5612 = vpop.f32.mrb[0].mxu0
  %5613 = vmatprep.mubr.f32.mxu0 0.0
  %5614 = vmatmul.mubr.f32.gmra.mrb[0].mxu0 %v5283
  %v5615 = vpop.f32.mrb[0].mxu0
  %v5616 = vadd.f32 0.0, %v5615
  %v5617 = vpop.f32.mrb[0].mxu0
  %5618 = vmatprep.mubr.f32.mxu0 0.0
  %5619 = vmatmul.mubr.f32.gmra.mrb[0].mxu0 %v5286
  %v5620 = vpop.f32.mrb[0].mxu0
  %v5621 = vadd.f32 0.0, %v5620
  %v5622 = vpop.f32.mrb[0].mxu0
  %5623 = vmatprep.mubr.f32.mxu0 0.0
  %5624 = vmatmul.mubr.f32.gmra.mrb[0].mxu0 %v5289
  %v5625 = vpop.f32.mrb[0].mxu0
  %v5626 = vadd.f32 0.0, %v5625
  %v5627 = vpop.f32.mrb[0].mxu0
  %5628 = vmatprep.mubr.f32.mxu0 0.0
  %5629 = vmatmul.mubr.f32.gmra.mrb[0].mxu0 %v5292
  %v5630 = vpop.f32.mrb[0].mxu0
  %v5631 = vadd.f32 0.0, %v5630
  %v5632 = vpop.f32.mrb[0].mxu0
  %5633 = vmatprep.mubr.f32.mxu0 0.0
  %5634 = vmatmul.mubr.f32.gmra.mrb[0].mxu0 %v5295
  %v5635 = vpop.f32.mrb[0].mxu0
  %v5636 = vadd.f32 0.0, %v5635
  %v5637 = vpop.f32.mrb[0].mxu0
  %5638 = vmatprep.mubr.f32.mxu0 0.0
  %5639 = vmatmul.mubr.f32.gmra.mrb[0].mxu0 %v5298
  %v5640 = vpop.f32.mrb[0].mxu0
  %v5641 = vadd.f32 0.0, %v5640
  %v5642 = vpop.f32.mrb[0].mxu0
  %5643 = vmatprep.mubr.f32.mxu0 0.0
  %5644 = vmatmul.mubr.f32.gmra.mrb[0].mxu0 %v5301
  %v5645 = vpop.f32.mrb[0].mxu0
  %v5646 = vadd.f32 0.0, %v5645
  %v5647 = vpop.f32.mrb[0].mxu0
  %5648 = vmatprep.mubr.f32.mxu0 0.0
  %5649 = vmatmul.mubr.f32.gmra.mrb[0].mxu0 %v5304
  %v5650 = vpop.f32.mrb[0].mxu0
  %v5651 = vadd.f32 0.0, %v5650
  %v5652 = vpop.f32.mrb[0].mxu0
  %5653 = vmatprep.mubr.f32.mxu0 0.0
  %5654 = vmatmul.mubr.f32.gmra.mrb[0].mxu0 %v5307
  %v5655 = vpop.f32.mrb[0].mxu0
  %v5656 = vadd.f32 0.0, %v5655
  %v5657 = vpop.f32.mrb[0].mxu0
  %5658 = vmatprep.mubr.f32.mxu0 0.0
  %5659 = vmatmul.mubr.f32.gmra.mrb[0].mxu0 %v5310
  %v5660 = vpop.f32.mrb[0].mxu0
  %v5661 = vadd.f32 0.0, %v5660
  %v5662 = vpop.f32.mrb[0].mxu0
  %5663 = vmatprep.mubr.f32.mxu0 0.0
  %5664 = vmatmul.mubr.f32.gmra.mrb[0].mxu0 %v5313
  %v5665 = vpop.f32.mrb[0].mxu0
  %v5666 = vadd.f32 0.0, %v5665
  %v5667 = vpop.f32.mrb[0].mxu0
  %5668 = vmatprep.mubr.f32.mxu0 0.0
  %5669 = vmatmul.mubr.f32.gmra.mrb[0].mxu0 %v5316
  %v5670 = vpop.f32.mrb[0].mxu0
  %v5671 = vadd.f32 0.0, %v5670
  %v5672 = vpop.f32.mrb[0].mxu0
  %5673 = vmatprep.mubr.f32.mxu0 0.0
  %5674 = vmatmul.mubr.f32.gmra.mrb[0].mxu0 %v5319
  %v5675 = vpop.f32.mrb[0].mxu0
  %v5676 = vadd.f32 0.0, %v5675
  %v5677 = vpop.f32.mrb[0].mxu0
  %5678 = vmatprep.mubr.f32.mxu0 0.0
  %5679 = vmatmul.mubr.f32.gmra.mrb[0].mxu0 %v5322
  %v5680 = vpop.f32.mrb[0].mxu0
  %v5681 = vadd.f32 0.0, %v5680
  %v5682 = vpop.f32.mrb[0].mxu0
  %5683 = vmatprep.mubr.f32.mxu0 0.0
  %5684 = vmatmul.mubr.f32.gmra.mrb[0].mxu0 %v5325
  %v5685 = vpop.f32.mrb[0].mxu0
  %v5686 = vadd.f32 0.0, %v5685
  %v5687 = vpop.f32.mrb[0].mxu0
  %5688 = vmatprep.mubr.f32.mxu0 0.0
  %5689 = vmatmul.mubr.f32.gmra.mrb[0].mxu0 %v5328
  %v5690 = vpop.f32.mrb[0].mxu0
  %v5691 = vadd.f32 0.0, %v5690
  %v5692 = vpop.f32.mrb[0].mxu0
  %5693 = vmatprep.mubr.f32.mxu0 0.0
  %5694 = vmatmul.mubr.f32.gmra.mrb[0].mxu0 %v5331
  %v5695 = vpop.f32.mrb[0].mxu0
  %v5696 = vadd.f32 0.0, %v5695
  %v5697 = vpop.f32.mrb[0].mxu0
  %5698 = vmatprep.mubr.f32.mxu0 0.0
  %5699 = vmatmul.mubr.f32.gmra.mrb[0].mxu0 %v5334
  %v5700 = vpop.f32.mrb[0].mxu0
  %v5701 = vadd.f32 0.0, %v5700
  %v5702 = vpop.f32.mrb[0].mxu0
  %5703 = vmatprep.mubr.f32.mxu0 0.0
  %5704 = vmatmul.mubr.f32.gmra.mrb[0].mxu0 %v5337
  %v5705 = vpop.f32.mrb[0].mxu0
  %v5706 = vadd.f32 0.0, %v5705
  %v5707 = vpop.f32.mrb[0].mxu0
  %5708 = vmatprep.mubr.f32.mxu0 0.0
  %5709 = vmatmul.mubr.f32.gmra.mrb[0].mxu0 %v5340
  %v5710 = vpop.f32.mrb[0].mxu0
  %v5711 = vadd.f32 0.0, %v5710
  %v5712 = vpop.f32.mrb[0].mxu0
  %5713 = vmatprep.mubr.f32.mxu0 0.0
  %5714 = vmatmul.mubr.f32.gmra.mrb[0].mxu0 %v5343
  %v5715 = vpop.f32.mrb[0].mxu0
  %v5716 = vadd.f32 0.0, %v5715
  %v5717 = vpop.f32.mrb[0].mxu0
  %5718 = vmatprep.mubr.f32.mxu0 0.0
  %5719 = vmatmul.mubr.f32.gmra.mrb[0].mxu0 %v5346
  %v5720 = vpop.f32.mrb[0].mxu0
  %v5721 = vadd.f32 0.0, %v5720
  %v5722 = vpop.f32.mrb[0].mxu0
  %5723 = vmatprep.mubr.f32.mxu0 0.0
  %5724 = vmatmul.mubr.f32.gmra.mrb[0].mxu0 %v5349
  %v5725 = vpop.f32.mrb[0].mxu0
  %v5726 = vadd.f32 0.0, %v5725
  %v5727 = vpop.f32.mrb[0].mxu0
  %5728 = vmatprep.mubr.f32.mxu0 0.0
  %5729 = vmatmul.mubr.f32.gmra.mrb[0].mxu0 %v5352
  %v5730 = vpop.f32.mrb[0].mxu0
  %v5731 = vadd.f32 0.0, %v5730
  %v5732 = vpop.f32.mrb[0].mxu0
  %5733 = vmatprep.mubr.f32.mxu0 0.0
  %5734 = vmatmul.mubr.f32.gmra.mrb[0].mxu0 %v5355
  %v5735 = vpop.f32.mrb[0].mxu0
  %v5736 = vadd.f32 0.0, %v5735
  %v5737 = vpop.f32.mrb[0].mxu0
  %5738 = vmatprep.mubr.f32.mxu0 0.0
  %5739 = vmatmul.mubr.f32.gmra.mrb[0].mxu0 %v5358
  %v5740 = vpop.f32.mrb[0].mxu0
  %v5741 = vadd.f32 0.0, %v5740
  %v5742 = vpop.f32.mrb[0].mxu0
  %5743 = vmatprep.mubr.f32.mxu0 0.0
  %5744 = vmatmul.mubr.f32.gmra.mrb[0].mxu0 %v5361
  %v5745 = vpop.f32.mrb[0].mxu0
  %v5746 = vadd.f32 0.0, %v5745
  %v5747 = vpop.f32.mrb[0].mxu0
  %5748 = vmatprep.mubr.f32.mxu0 0.0
  %5749 = vmatmul.mubr.f32.gmra.mrb[0].mxu0 %v5364
  %v5750 = vpop.f32.mrb[0].mxu0
  %v5751 = vadd.f32 0.0, %v5750
  %v5752 = vpop.f32.mrb[0].mxu0
  %5753 = vdwg.mxu0
  %v5754 = vadd.f32 %v5044, %v5436
  %v5755 = vadd.f32 %v5045, %v5441
  %v5756 = vadd.f32 %v5046, %v5446
  %v5757 = vadd.f32 %v5047, %v5451
  %v5758 = vadd.f32 %v5048, %v5456
  %v5759 = vadd.f32 %v5049, %v5461
  %v5760 = vadd.f32 %v5050, %v5466
  %v5761 = vadd.f32 %v5051, %v5471
  %v5762 = vadd.f32 %v5052, %v5476
  %v5763 = vadd.f32 %v5053, %v5481
  %v5764 = vadd.f32 %v5054, %v5486
  %v5765 = vadd.f32 %v5055, %v5491
  %v5766 = vadd.f32 %v5056, %v5496
  %v5767 = vadd.f32 %v5057, %v5501
  %v5768 = vadd.f32 %v5058, %v5506
  %v5769 = vadd.f32 %v5059, %v5511
  %v5770 = vadd.f32 %v5060, %v5516
  %v5771 = vadd.f32 %v5061, %v5521
  %v5772 = vadd.f32 %v5062, %v5526
  %v5773 = vadd.f32 %v5063, %v5531
  %v5774 = vadd.f32 %v5064, %v5536
  %v5775 = vadd.f32 %v5065, %v5541
  %v5776 = vadd.f32 %v5066, %v5546
  %v5777 = vadd.f32 %v5067, %v5551
  %v5778 = vadd.f32 %v5068, %v5556
  %v5779 = vadd.f32 %v5069, %v5561
  %v5780 = vadd.f32 %v5070, %v5566
  %v5781 = vadd.f32 %v5071, %v5571
  %v5782 = vadd.f32 %v5072, %v5576
  %v5783 = vadd.f32 %v5073, %v5581
  %v5784 = vadd.f32 %v5074, %v5586
  %v5785 = vadd.f32 %v5075, %v5591
  %v5786 = vadd.f32 %v5076, %v5596
  %v5787 = vadd.f32 %v5077, %v5601
  %v5788 = vadd.f32 %v5078, %v5606
  %v5789 = vadd.f32 %v5079, %v5611
  %v5790 = vadd.f32 %v5080, %v5616
  %v5791 = vadd.f32 %v5081, %v5621
  %v5792 = vadd.f32 %v5082, %v5626
  %v5793 = vadd.f32 %v5083, %v5631
  %v5794 = vadd.f32 %v5084, %v5636
  %v5795 = vadd.f32 %v5085, %v5641
  %v5796 = vadd.f32 %v5086, %v5646
  %v5797 = vadd.f32 %v5087, %v5651
  %v5798 = vadd.f32 %v5088, %v5656
  %v5799 = vadd.f32 %v5089, %v5661
  %v5800 = vadd.f32 %v5090, %v5666
  %v5801 = vadd.f32 %v5091, %v5671
  %v5802 = vadd.f32 %v5092, %v5676
  %v5803 = vadd.f32 %v5093, %v5681
  %v5804 = vadd.f32 %v5094, %v5686
  %v5805 = vadd.f32 %v5095, %v5691
  %v5806 = vadd.f32 %v5096, %v5696
  %v5807 = vadd.f32 %v5097, %v5701
  %v5808 = vadd.f32 %v5098, %v5706
  %v5809 = vadd.f32 %v5099, %v5711
  %v5810 = vadd.f32 %v5100, %v5716
  %v5811 = vadd.f32 %v5101, %v5721
  %v5812 = vadd.f32 %v5102, %v5726
  %v5813 = vadd.f32 %v5103, %v5731
  %v5814 = vadd.f32 %v5104, %v5736
  %v5815 = vadd.f32 %v5105, %v5741
  %v5816 = vadd.f32 %v5106, %v5746
  %v5817 = vadd.f32 %v5107, %v5751
  %v5818 = vld [vmem:[%s4397 + $0x2] sm:$0xff]
  %v5819 = vld [vmem:[%s4397 + $0xa] sm:$0xff]
  %v5820 = vld [vmem:[%s4397 + $0x1a] sm:$0xff]
  %v5821 = vld [vmem:[%s4397 + $0x22] sm:$0xff]
  %v5822 = vld [vmem:[%s4397 + $0x32] sm:$0xff]
  %v5823 = vld [vmem:[%s4397 + $0x3a] sm:$0xff]
  %v5824 = vld [vmem:[%s4397 + $0x4a] sm:$0xff]
  %v5825 = vld [vmem:[%s4397 + $0x52] sm:$0xff]
  %v5826 = vld [vmem:[%s4397 + $0x62] sm:$0xff]
  %v5827 = vld [vmem:[%s4397 + $0x6a] sm:$0xff]
  %v5828 = vld [vmem:[%s4397 + $0x7a] sm:$0xff]
  %v5829 = vld [vmem:[%s4397 + $0x82] sm:$0xff]
  %v5830 = vld [vmem:[%s4397 + $0x92] sm:$0xff]
  %v5831 = vld [vmem:[%s4397 + $0x9a] sm:$0xff]
  %v5832 = vld [vmem:[%s4397 + $0xaa] sm:$0xff]
  %v5833 = vld [vmem:[%s4397 + $0xb2] sm:$0xff]
  %v5834 = vld [vmem:[%s4397 + $0xc2] sm:$0xff]
  %v5835 = vld [vmem:[%s4397 + $0xca] sm:$0xff]
  %v5836 = vld [vmem:[%s4397 + $0xda] sm:$0xff]
  %v5837 = vld [vmem:[%s4397 + $0xe2] sm:$0xff]
  %v5838 = vld [vmem:[%s4397 + $0xf2] sm:$0xff]
  %v5839 = vld [vmem:[%s4397 + $0xfa] sm:$0xff]
  %v5840 = vld [vmem:[%s4397 + $0x10a] sm:$0xff]
  %v5841 = vld [vmem:[%s4397 + $0x112] sm:$0xff]
  %v5842 = vld [vmem:[%s4397 + $0x122] sm:$0xff]
  %v5843 = vld [vmem:[%s4397 + $0x12a] sm:$0xff]
  %v5844 = vld [vmem:[%s4397 + $0x13a] sm:$0xff]
  %v5845 = vld [vmem:[%s4397 + $0x142] sm:$0xff]
  %v5846 = vld [vmem:[%s4397 + $0x152] sm:$0xff]
  %v5847 = vld [vmem:[%s4397 + $0x15a] sm:$0xff]
  %v5848 = vld [vmem:[%s4397 + $0x16a] sm:$0xff]
  %v5849 = vld [vmem:[%s4397 + $0x172] sm:$0xff]
  %v5850 = vld [vmem:[%s4397 + $0x1b2] sm:$0xff]
  %v5851 = vld [vmem:[%s4397 + $0x1ba] sm:$0xff]
  %v5852 = vld [vmem:[%s4397 + $0x1ca] sm:$0xff]
  %v5853 = vld [vmem:[%s4397 + $0x1d2] sm:$0xff]
  %v5854 = vld [vmem:[%s4397 + $0x1e2] sm:$0xff]
  %v5855 = vld [vmem:[%s4397 + $0x1ea] sm:$0xff]
  %v5856 = vld [vmem:[%s4397 + $0x1fa] sm:$0xff]
  %v5857 = vld [vmem:[%s4397 + $0x202] sm:$0xff]
  %v5858 = vld [vmem:[%s4397 + $0x212] sm:$0xff]
  %v5859 = vld [vmem:[%s4397 + $0x21a] sm:$0xff]
  %v5860 = vld [vmem:[%s4397 + $0x22a] sm:$0xff]
  %v5861 = vld [vmem:[%s4397 + $0x232] sm:$0xff]
  %v5862 = vld [vmem:[%s4397 + $0x242] sm:$0xff]
  %v5863 = vld [vmem:[%s4397 + $0x24a] sm:$0xff]
  %v5864 = vld [vmem:[%s4397 + $0x25a] sm:$0xff]
  %v5865 = vld [vmem:[%s4397 + $0x262] sm:$0xff]
  %v5866 = vld [vmem:[%s4397 + $0x272] sm:$0xff]
  %v5867 = vld [vmem:[%s4397 + $0x27a] sm:$0xff]
  %v5868 = vld [vmem:[%s4397 + $0x28a] sm:$0xff]
  %v5869 = vld [vmem:[%s4397 + $0x292] sm:$0xff]
  %v5870 = vld [vmem:[%s4397 + $0x2a2] sm:$0xff]
  %v5871 = vld [vmem:[%s4397 + $0x2aa] sm:$0xff]
  %v5872 = vld [vmem:[%s4397 + $0x2ba] sm:$0xff]
  %v5873 = vld [vmem:[%s4397 + $0x2c2] sm:$0xff]
  %v5874 = vld [vmem:[%s4397 + $0x2d2] sm:$0xff]
  %v5875 = vld [vmem:[%s4397 + $0x2da] sm:$0xff]
  %v5876 = vld [vmem:[%s4397 + $0x2ea] sm:$0xff]
  %v5877 = vld [vmem:[%s4397 + $0x2f2] sm:$0xff]
  %v5878 = vld [vmem:[%s4397 + $0x302] sm:$0xff]
  %v5879 = vld [vmem:[%s4397 + $0x30a] sm:$0xff]
  %v5880 = vld [vmem:[%s4397 + $0x31a] sm:$0xff]
  %v5881 = vld [vmem:[%s4397 + $0x322] sm:$0xff]
  %s5882 = scalar_lea.vmem %s1, 32
  %v5883 = vld [vmem:[%s5882] sm:$0xf]
  %v5885 = vsel %vm26, %v5818, 0
  %v5888 = vsel %vm26, %v5819, 0
  %v5891 = vsel %vm26, %v5820, 0
  %v5894 = vsel %vm26, %v5821, 0
  %v5897 = vsel %vm26, %v5822, 0
  %v5900 = vsel %vm26, %v5823, 0
  %v5903 = vsel %vm26, %v5824, 0
  %v5906 = vsel %vm26, %v5825, 0
  %v5909 = vsel %vm26, %v5826, 0
  %v5912 = vsel %vm26, %v5827, 0
  %v5915 = vsel %vm26, %v5828, 0
  %v5918 = vsel %vm26, %v5829, 0
  %v5921 = vsel %vm26, %v5830, 0
  %v5924 = vsel %vm26, %v5831, 0
  %v5927 = vsel %vm26, %v5832, 0
  %v5930 = vsel %vm26, %v5833, 0
  %v5933 = vsel %vm26, %v5834, 0
  %v5936 = vsel %vm26, %v5835, 0
  %v5939 = vsel %vm26, %v5836, 0
  %v5942 = vsel %vm26, %v5837, 0
  %v5945 = vsel %vm26, %v5838, 0
  %v5948 = vsel %vm26, %v5839, 0
  %v5951 = vsel %vm26, %v5840, 0
  %v5954 = vsel %vm26, %v5841, 0
  %v5957 = vsel %vm26, %v5842, 0
  %v5960 = vsel %vm26, %v5843, 0
  %v5963 = vsel %vm26, %v5844, 0
  %v5966 = vsel %vm26, %v5845, 0
  %v5969 = vsel %vm26, %v5846, 0
  %v5972 = vsel %vm26, %v5847, 0
  %v5975 = vsel %vm26, %v5848, 0
  %v5978 = vsel %vm26, %v5849, 0
  %v5981 = vsel %vm26, %v5850, 0
  %v5984 = vsel %vm26, %v5851, 0
  %v5987 = vsel %vm26, %v5852, 0
  %v5990 = vsel %vm26, %v5853, 0
  %v5993 = vsel %vm26, %v5854, 0
  %v5996 = vsel %vm26, %v5855, 0
  %v5999 = vsel %vm26, %v5856, 0
  %v6002 = vsel %vm26, %v5857, 0
  %v6005 = vsel %vm26, %v5858, 0
  %v6008 = vsel %vm26, %v5859, 0
  %v6011 = vsel %vm26, %v5860, 0
  %v6014 = vsel %vm26, %v5861, 0
  %v6017 = vsel %vm26, %v5862, 0
  %v6020 = vsel %vm26, %v5863, 0
  %v6023 = vsel %vm26, %v5864, 0
  %v6026 = vsel %vm26, %v5865, 0
  %v6029 = vsel %vm26, %v5866, 0
  %v6032 = vsel %vm26, %v5867, 0
  %v6035 = vsel %vm26, %v5868, 0
  %v6038 = vsel %vm26, %v5869, 0
  %v6041 = vsel %vm26, %v5870, 0
  %v6044 = vsel %vm26, %v5871, 0
  %v6047 = vsel %vm26, %v5872, 0
  %v6050 = vsel %vm26, %v5873, 0
  %v6053 = vsel %vm26, %v5874, 0
  %v6056 = vsel %vm26, %v5875, 0
  %v6059 = vsel %vm26, %v5876, 0
  %v6062 = vsel %vm26, %v5877, 0
  %v6065 = vsel %vm26, %v5878, 0
  %v6068 = vsel %vm26, %v5879, 0
  %v6071 = vsel %vm26, %v5880, 0
  %v6074 = vsel %vm26, %v5881, 0
  %v6077 = vsel %vm588, %v5883, 0
  %6079 = vmatprep.subr.mxu0 0.0
  %6080 = vmatpush1.msra.mxu0 %v6077
  %6081 = vmatprep.subr.mxu0 0.0
  %6082 = vmatpush1.msra.mxu0 0.0
  %6083 = vmatprep.subr.mxu0 0.0
  %6084 = vmatpush1.msra.mxu0 0.0
  %6085 = vmatprep.subr.mxu0 0.0
  %6086 = vmatpush1.msra.mxu0 0.0
  %6087 = vmatprep.subr.mxu0 0.0
  %6088 = vmatpush1.msra.mxu0 0.0
  %6089 = vmatprep.subr.mxu0 0.0
  %6090 = vmatpush1.msra.mxu0 0.0
  %6091 = vmatprep.subr.mxu0 0.0
  %6092 = vmatpush1.msra.mxu0 0.0
  %6093 = vmatprep.subr.mxu0 0.0
  %6094 = vmatpush1.msra.mxu0 0.0
  %6095 = vmatprep.subr.mxu0 0.0
  %6096 = vmatpush1.msra.mxu0 0.0
  %6097 = vmatprep.subr.mxu0 0.0
  %6098 = vmatpush1.msra.mxu0 0.0
  %6099 = vmatprep.subr.mxu0 0.0
  %6100 = vmatpush1.msra.mxu0 0.0
  %6101 = vmatprep.subr.mxu0 0.0
  %6102 = vmatpush1.msra.mxu0 0.0
  %6103 = vmatprep.subr.mxu0 0.0
  %6104 = vmatpush1.msra.mxu0 0.0
  %6105 = vmatprep.subr.mxu0 0.0
  %6106 = vmatpush1.msra.mxu0 0.0
  %6107 = vmatprep.subr.mxu0 0.0
  %6108 = vmatpush1.msra.mxu0 0.0
  %6109 = vmatprep.subr.mxu0 0.0
  %6110 = vmatpush1.msra.mxu0 0.0
  %6111 = vmatprep.subr.mxu0 0.0
  %6112 = vmatpush1.msra.mxu0 0.0
  %6113 = vmatprep.subr.mxu0 0.0
  %6114 = vmatpush1.msra.mxu0 0.0
  %6115 = vmatprep.subr.mxu0 0.0
  %6116 = vmatpush1.msra.mxu0 0.0
  %6117 = vmatprep.subr.mxu0 0.0
  %6118 = vmatpush1.msra.mxu0 0.0
  %6119 = vmatprep.subr.mxu0 0.0
  %6120 = vmatpush1.msra.mxu0 0.0
  %6121 = vmatprep.subr.mxu0 0.0
  %6122 = vmatpush1.msra.mxu0 0.0
  %6123 = vmatprep.subr.mxu0 0.0
  %6124 = vmatpush1.msra.mxu0 0.0
  %6125 = vmatprep.subr.mxu0 0.0
  %6126 = vmatpush1.msra.mxu0 0.0
  %6127 = vmatprep.subr.mxu0 0.0
  %6128 = vmatpush1.msra.mxu0 0.0
  %6129 = vmatprep.subr.mxu0 0.0
  %6130 = vmatpush1.msra.mxu0 0.0
  %6131 = vmatprep.subr.mxu0 0.0
  %6132 = vmatpush1.msra.mxu0 0.0
  %6133 = vmatprep.subr.mxu0 0.0
  %6134 = vmatpush1.msra.mxu0 0.0
  %6135 = vmatprep.subr.mxu0 0.0
  %6136 = vmatpush1.msra.mxu0 0.0
  %6137 = vmatprep.subr.mxu0 0.0
  %6138 = vmatpush1.msra.mxu0 0.0
  %6139 = vmatprep.subr.mxu0 0.0
  %6140 = vmatpush1.msra.mxu0 0.0
  %6141 = vmatprep.subr.mxu0 0.0
  %6142 = vmatpush1.msra.mxu0 0.0
  %6143 = vmatprep.mubr.f32.mxu0 0.0
  %6144 = vmatmul.mubr.f32.gmra.mrb[0].mxu0 %v5885
  %v6145 = vpop.f32.mrb[0].mxu0
  %v6146 = vadd.f32 0.0, %v6145
  %v6147 = vpop.f32.mrb[0].mxu0
  %6148 = vmatprep.mubr.f32.mxu0 0.0
  %6149 = vmatmul.mubr.f32.gmra.mrb[0].mxu0 %v5888
  %v6150 = vpop.f32.mrb[0].mxu0
  %v6151 = vadd.f32 0.0, %v6150
  %v6152 = vpop.f32.mrb[0].mxu0
  %6153 = vmatprep.mubr.f32.mxu0 0.0
  %6154 = vmatmul.mubr.f32.gmra.mrb[0].mxu0 %v5891
  %v6155 = vpop.f32.mrb[0].mxu0
  %v6156 = vadd.f32 0.0, %v6155
  %v6157 = vpop.f32.mrb[0].mxu0
  %6158 = vmatprep.mubr.f32.mxu0 0.0
  %6159 = vmatmul.mubr.f32.gmra.mrb[0].mxu0 %v5894
  %v6160 = vpop.f32.mrb[0].mxu0
  %v6161 = vadd.f32 0.0, %v6160
  %v6162 = vpop.f32.mrb[0].mxu0
  %6163 = vmatprep.mubr.f32.mxu0 0.0
  %6164 = vmatmul.mubr.f32.gmra.mrb[0].mxu0 %v5897
  %v6165 = vpop.f32.mrb[0].mxu0
  %v6166 = vadd.f32 0.0, %v6165
  %v6167 = vpop.f32.mrb[0].mxu0
  %6168 = vmatprep.mubr.f32.mxu0 0.0
  %6169 = vmatmul.mubr.f32.gmra.mrb[0].mxu0 %v5900
  %v6170 = vpop.f32.mrb[0].mxu0
  %v6171 = vadd.f32 0.0, %v6170
  %v6172 = vpop.f32.mrb[0].mxu0
  %6173 = vmatprep.mubr.f32.mxu0 0.0
  %6174 = vmatmul.mubr.f32.gmra.mrb[0].mxu0 %v5903
  %v6175 = vpop.f32.mrb[0].mxu0
  %v6176 = vadd.f32 0.0, %v6175
  %v6177 = vpop.f32.mrb[0].mxu0
  %6178 = vmatprep.mubr.f32.mxu0 0.0
  %6179 = vmatmul.mubr.f32.gmra.mrb[0].mxu0 %v5906
  %v6180 = vpop.f32.mrb[0].mxu0
  %v6181 = vadd.f32 0.0, %v6180
  %v6182 = vpop.f32.mrb[0].mxu0
  %6183 = vmatprep.mubr.f32.mxu0 0.0
  %6184 = vmatmul.mubr.f32.gmra.mrb[0].mxu0 %v5909
  %v6185 = vpop.f32.mrb[0].mxu0
  %v6186 = vadd.f32 0.0, %v6185
  %v6187 = vpop.f32.mrb[0].mxu0
  %6188 = vmatprep.mubr.f32.mxu0 0.0
  %6189 = vmatmul.mubr.f32.gmra.mrb[0].mxu0 %v5912
  %v6190 = vpop.f32.mrb[0].mxu0
  %v6191 = vadd.f32 0.0, %v6190
  %v6192 = vpop.f32.mrb[0].mxu0
  %6193 = vmatprep.mubr.f32.mxu0 0.0
  %6194 = vmatmul.mubr.f32.gmra.mrb[0].mxu0 %v5915
  %v6195 = vpop.f32.mrb[0].mxu0
  %v6196 = vadd.f32 0.0, %v6195
  %v6197 = vpop.f32.mrb[0].mxu0
  %6198 = vmatprep.mubr.f32.mxu0 0.0
  %6199 = vmatmul.mubr.f32.gmra.mrb[0].mxu0 %v5918
  %v6200 = vpop.f32.mrb[0].mxu0
  %v6201 = vadd.f32 0.0, %v6200
  %v6202 = vpop.f32.mrb[0].mxu0
  %6203 = vmatprep.mubr.f32.mxu0 0.0
  %6204 = vmatmul.mubr.f32.gmra.mrb[0].mxu0 %v5921
  %v6205 = vpop.f32.mrb[0].mxu0
  %v6206 = vadd.f32 0.0, %v6205
  %v6207 = vpop.f32.mrb[0].mxu0
  %6208 = vmatprep.mubr.f32.mxu0 0.0
  %6209 = vmatmul.mubr.f32.gmra.mrb[0].mxu0 %v5924
  %v6210 = vpop.f32.mrb[0].mxu0
  %v6211 = vadd.f32 0.0, %v6210
  %v6212 = vpop.f32.mrb[0].mxu0
  %6213 = vmatprep.mubr.f32.mxu0 0.0
  %6214 = vmatmul.mubr.f32.gmra.mrb[0].mxu0 %v5927
  %v6215 = vpop.f32.mrb[0].mxu0
  %v6216 = vadd.f32 0.0, %v6215
  %v6217 = vpop.f32.mrb[0].mxu0
  %6218 = vmatprep.mubr.f32.mxu0 0.0
  %6219 = vmatmul.mubr.f32.gmra.mrb[0].mxu0 %v5930
  %v6220 = vpop.f32.mrb[0].mxu0
  %v6221 = vadd.f32 0.0, %v6220
  %v6222 = vpop.f32.mrb[0].mxu0
  %6223 = vmatprep.mubr.f32.mxu0 0.0
  %6224 = vmatmul.mubr.f32.gmra.mrb[0].mxu0 %v5933
  %v6225 = vpop.f32.mrb[0].mxu0
  %v6226 = vadd.f32 0.0, %v6225
  %v6227 = vpop.f32.mrb[0].mxu0
  %6228 = vmatprep.mubr.f32.mxu0 0.0
  %6229 = vmatmul.mubr.f32.gmra.mrb[0].mxu0 %v5936
  %v6230 = vpop.f32.mrb[0].mxu0
  %v6231 = vadd.f32 0.0, %v6230
  %v6232 = vpop.f32.mrb[0].mxu0
  %6233 = vmatprep.mubr.f32.mxu0 0.0
  %6234 = vmatmul.mubr.f32.gmra.mrb[0].mxu0 %v5939
  %v6235 = vpop.f32.mrb[0].mxu0
  %v6236 = vadd.f32 0.0, %v6235
  %v6237 = vpop.f32.mrb[0].mxu0
  %6238 = vmatprep.mubr.f32.mxu0 0.0
  %6239 = vmatmul.mubr.f32.gmra.mrb[0].mxu0 %v5942
  %v6240 = vpop.f32.mrb[0].mxu0
  %v6241 = vadd.f32 0.0, %v6240
  %v6242 = vpop.f32.mrb[0].mxu0
  %6243 = vmatprep.mubr.f32.mxu0 0.0
  %6244 = vmatmul.mubr.f32.gmra.mrb[0].mxu0 %v5945
  %v6245 = vpop.f32.mrb[0].mxu0
  %v6246 = vadd.f32 0.0, %v6245
  %v6247 = vpop.f32.mrb[0].mxu0
  %6248 = vmatprep.mubr.f32.mxu0 0.0
  %6249 = vmatmul.mubr.f32.gmra.mrb[0].mxu0 %v5948
  %v6250 = vpop.f32.mrb[0].mxu0
  %v6251 = vadd.f32 0.0, %v6250
  %v6252 = vpop.f32.mrb[0].mxu0
  %6253 = vmatprep.mubr.f32.mxu0 0.0
  %6254 = vmatmul.mubr.f32.gmra.mrb[0].mxu0 %v5951
  %v6255 = vpop.f32.mrb[0].mxu0
  %v6256 = vadd.f32 0.0, %v6255
  %v6257 = vpop.f32.mrb[0].mxu0
  %6258 = vmatprep.mubr.f32.mxu0 0.0
  %6259 = vmatmul.mubr.f32.gmra.mrb[0].mxu0 %v5954
  %v6260 = vpop.f32.mrb[0].mxu0
  %v6261 = vadd.f32 0.0, %v6260
  %v6262 = vpop.f32.mrb[0].mxu0
  %6263 = vmatprep.mubr.f32.mxu0 0.0
  %6264 = vmatmul.mubr.f32.gmra.mrb[0].mxu0 %v5957
  %v6265 = vpop.f32.mrb[0].mxu0
  %v6266 = vadd.f32 0.0, %v6265
  %v6267 = vpop.f32.mrb[0].mxu0
  %6268 = vmatprep.mubr.f32.mxu0 0.0
  %6269 = vmatmul.mubr.f32.gmra.mrb[0].mxu0 %v5960
  %v6270 = vpop.f32.mrb[0].mxu0
  %v6271 = vadd.f32 0.0, %v6270
  %v6272 = vpop.f32.mrb[0].mxu0
  %6273 = vmatprep.mubr.f32.mxu0 0.0
  %6274 = vmatmul.mubr.f32.gmra.mrb[0].mxu0 %v5963
  %v6275 = vpop.f32.mrb[0].mxu0
  %v6276 = vadd.f32 0.0, %v6275
  %v6277 = vpop.f32.mrb[0].mxu0
  %6278 = vmatprep.mubr.f32.mxu0 0.0
  %6279 = vmatmul.mubr.f32.gmra.mrb[0].mxu0 %v5966
  %v6280 = vpop.f32.mrb[0].mxu0
  %v6281 = vadd.f32 0.0, %v6280
  %v6282 = vpop.f32.mrb[0].mxu0
  %6283 = vmatprep.mubr.f32.mxu0 0.0
  %6284 = vmatmul.mubr.f32.gmra.mrb[0].mxu0 %v5969
  %v6285 = vpop.f32.mrb[0].mxu0
  %v6286 = vadd.f32 0.0, %v6285
  %v6287 = vpop.f32.mrb[0].mxu0
  %6288 = vmatprep.mubr.f32.mxu0 0.0
  %6289 = vmatmul.mubr.f32.gmra.mrb[0].mxu0 %v5972
  %v6290 = vpop.f32.mrb[0].mxu0
  %v6291 = vadd.f32 0.0, %v6290
  %v6292 = vpop.f32.mrb[0].mxu0
  %6293 = vmatprep.mubr.f32.mxu0 0.0
  %6294 = vmatmul.mubr.f32.gmra.mrb[0].mxu0 %v5975
  %v6295 = vpop.f32.mrb[0].mxu0
  %v6296 = vadd.f32 0.0, %v6295
  %v6297 = vpop.f32.mrb[0].mxu0
  %6298 = vmatprep.mubr.f32.mxu0 0.0
  %6299 = vmatmul.mubr.f32.gmra.mrb[0].mxu0 %v5978
  %v6300 = vpop.f32.mrb[0].mxu0
  %v6301 = vadd.f32 0.0, %v6300
  %v6302 = vpop.f32.mrb[0].mxu0
  %6303 = vmatprep.mubr.f32.mxu0 0.0
  %6304 = vmatmul.mubr.f32.gmra.mrb[0].mxu0 %v5981
  %v6305 = vpop.f32.mrb[0].mxu0
  %v6306 = vadd.f32 0.0, %v6305
  %v6307 = vpop.f32.mrb[0].mxu0
  %6308 = vmatprep.mubr.f32.mxu0 0.0
  %6309 = vmatmul.mubr.f32.gmra.mrb[0].mxu0 %v5984
  %v6310 = vpop.f32.mrb[0].mxu0
  %v6311 = vadd.f32 0.0, %v6310
  %v6312 = vpop.f32.mrb[0].mxu0
  %6313 = vmatprep.mubr.f32.mxu0 0.0
  %6314 = vmatmul.mubr.f32.gmra.mrb[0].mxu0 %v5987
  %v6315 = vpop.f32.mrb[0].mxu0
  %v6316 = vadd.f32 0.0, %v6315
  %v6317 = vpop.f32.mrb[0].mxu0
  %6318 = vmatprep.mubr.f32.mxu0 0.0
  %6319 = vmatmul.mubr.f32.gmra.mrb[0].mxu0 %v5990
  %v6320 = vpop.f32.mrb[0].mxu0
  %v6321 = vadd.f32 0.0, %v6320
  %v6322 = vpop.f32.mrb[0].mxu0
  %6323 = vmatprep.mubr.f32.mxu0 0.0
  %6324 = vmatmul.mubr.f32.gmra.mrb[0].mxu0 %v5993
  %v6325 = vpop.f32.mrb[0].mxu0
  %v6326 = vadd.f32 0.0, %v6325
  %v6327 = vpop.f32.mrb[0].mxu0
  %6328 = vmatprep.mubr.f32.mxu0 0.0
  %6329 = vmatmul.mubr.f32.gmra.mrb[0].mxu0 %v5996
  %v6330 = vpop.f32.mrb[0].mxu0
  %v6331 = vadd.f32 0.0, %v6330
  %v6332 = vpop.f32.mrb[0].mxu0
  %6333 = vmatprep.mubr.f32.mxu0 0.0
  %6334 = vmatmul.mubr.f32.gmra.mrb[0].mxu0 %v5999
  %v6335 = vpop.f32.mrb[0].mxu0
  %v6336 = vadd.f32 0.0, %v6335
  %v6337 = vpop.f32.mrb[0].mxu0
  %6338 = vmatprep.mubr.f32.mxu0 0.0
  %6339 = vmatmul.mubr.f32.gmra.mrb[0].mxu0 %v6002
  %v6340 = vpop.f32.mrb[0].mxu0
  %v6341 = vadd.f32 0.0, %v6340
  %v6342 = vpop.f32.mrb[0].mxu0
  %6343 = vmatprep.mubr.f32.mxu0 0.0
  %6344 = vmatmul.mubr.f32.gmra.mrb[0].mxu0 %v6005
  %v6345 = vpop.f32.mrb[0].mxu0
  %v6346 = vadd.f32 0.0, %v6345
  %v6347 = vpop.f32.mrb[0].mxu0
  %6348 = vmatprep.mubr.f32.mxu0 0.0
  %6349 = vmatmul.mubr.f32.gmra.mrb[0].mxu0 %v6008
  %v6350 = vpop.f32.mrb[0].mxu0
  %v6351 = vadd.f32 0.0, %v6350
  %v6352 = vpop.f32.mrb[0].mxu0
  %6353 = vmatprep.mubr.f32.mxu0 0.0
  %6354 = vmatmul.mubr.f32.gmra.mrb[0].mxu0 %v6011
  %v6355 = vpop.f32.mrb[0].mxu0
  %v6356 = vadd.f32 0.0, %v6355
  %v6357 = vpop.f32.mrb[0].mxu0
  %6358 = vmatprep.mubr.f32.mxu0 0.0
  %6359 = vmatmul.mubr.f32.gmra.mrb[0].mxu0 %v6014
  %v6360 = vpop.f32.mrb[0].mxu0
  %v6361 = vadd.f32 0.0, %v6360
  %v6362 = vpop.f32.mrb[0].mxu0
  %6363 = vmatprep.mubr.f32.mxu0 0.0
  %6364 = vmatmul.mubr.f32.gmra.mrb[0].mxu0 %v6017
  %v6365 = vpop.f32.mrb[0].mxu0
  %v6366 = vadd.f32 0.0, %v6365
  %v6367 = vpop.f32.mrb[0].mxu0
  %6368 = vmatprep.mubr.f32.mxu0 0.0
  %6369 = vmatmul.mubr.f32.gmra.mrb[0].mxu0 %v6020
  %v6370 = vpop.f32.mrb[0].mxu0
  %v6371 = vadd.f32 0.0, %v6370
  %v6372 = vpop.f32.mrb[0].mxu0
  %6373 = vmatprep.mubr.f32.mxu0 0.0
  %6374 = vmatmul.mubr.f32.gmra.mrb[0].mxu0 %v6023
  %v6375 = vpop.f32.mrb[0].mxu0
  %v6376 = vadd.f32 0.0, %v6375
  %v6377 = vpop.f32.mrb[0].mxu0
  %6378 = vmatprep.mubr.f32.mxu0 0.0
  %6379 = vmatmul.mubr.f32.gmra.mrb[0].mxu0 %v6026
  %v6380 = vpop.f32.mrb[0].mxu0
  %v6381 = vadd.f32 0.0, %v6380
  %v6382 = vpop.f32.mrb[0].mxu0
  %6383 = vmatprep.mubr.f32.mxu0 0.0
  %6384 = vmatmul.mubr.f32.gmra.mrb[0].mxu0 %v6029
  %v6385 = vpop.f32.mrb[0].mxu0
  %v6386 = vadd.f32 0.0, %v6385
  %v6387 = vpop.f32.mrb[0].mxu0
  %6388 = vmatprep.mubr.f32.mxu0 0.0
  %6389 = vmatmul.mubr.f32.gmra.mrb[0].mxu0 %v6032
  %v6390 = vpop.f32.mrb[0].mxu0
  %v6391 = vadd.f32 0.0, %v6390
  %v6392 = vpop.f32.mrb[0].mxu0
  %6393 = vmatprep.mubr.f32.mxu0 0.0
  %6394 = vmatmul.mubr.f32.gmra.mrb[0].mxu0 %v6035
  %v6395 = vpop.f32.mrb[0].mxu0
  %v6396 = vadd.f32 0.0, %v6395
  %v6397 = vpop.f32.mrb[0].mxu0
  %6398 = vmatprep.mubr.f32.mxu0 0.0
  %6399 = vmatmul.mubr.f32.gmra.mrb[0].mxu0 %v6038
  %v6400 = vpop.f32.mrb[0].mxu0
  %v6401 = vadd.f32 0.0, %v6400
  %v6402 = vpop.f32.mrb[0].mxu0
  %6403 = vmatprep.mubr.f32.mxu0 0.0
  %6404 = vmatmul.mubr.f32.gmra.mrb[0].mxu0 %v6041
  %v6405 = vpop.f32.mrb[0].mxu0
  %v6406 = vadd.f32 0.0, %v6405
  %v6407 = vpop.f32.mrb[0].mxu0
  %6408 = vmatprep.mubr.f32.mxu0 0.0
  %6409 = vmatmul.mubr.f32.gmra.mrb[0].mxu0 %v6044
  %v6410 = vpop.f32.mrb[0].mxu0
  %v6411 = vadd.f32 0.0, %v6410
  %v6412 = vpop.f32.mrb[0].mxu0
  %6413 = vmatprep.mubr.f32.mxu0 0.0
  %6414 = vmatmul.mubr.f32.gmra.mrb[0].mxu0 %v6047
  %v6415 = vpop.f32.mrb[0].mxu0
  %v6416 = vadd.f32 0.0, %v6415
  %v6417 = vpop.f32.mrb[0].mxu0
  %6418 = vmatprep.mubr.f32.mxu0 0.0
  %6419 = vmatmul.mubr.f32.gmra.mrb[0].mxu0 %v6050
  %v6420 = vpop.f32.mrb[0].mxu0
  %v6421 = vadd.f32 0.0, %v6420
  %v6422 = vpop.f32.mrb[0].mxu0
  %6423 = vmatprep.mubr.f32.mxu0 0.0
  %6424 = vmatmul.mubr.f32.gmra.mrb[0].mxu0 %v6053
  %v6425 = vpop.f32.mrb[0].mxu0
  %v6426 = vadd.f32 0.0, %v6425
  %v6427 = vpop.f32.mrb[0].mxu0
  %6428 = vmatprep.mubr.f32.mxu0 0.0
  %6429 = vmatmul.mubr.f32.gmra.mrb[0].mxu0 %v6056
  %v6430 = vpop.f32.mrb[0].mxu0
  %v6431 = vadd.f32 0.0, %v6430
  %v6432 = vpop.f32.mrb[0].mxu0
  %6433 = vmatprep.mubr.f32.mxu0 0.0
  %6434 = vmatmul.mubr.f32.gmra.mrb[0].mxu0 %v6059
  %v6435 = vpop.f32.mrb[0].mxu0
  %v6436 = vadd.f32 0.0, %v6435
  %v6437 = vpop.f32.mrb[0].mxu0
  %6438 = vmatprep.mubr.f32.mxu0 0.0
  %6439 = vmatmul.mubr.f32.gmra.mrb[0].mxu0 %v6062
  %v6440 = vpop.f32.mrb[0].mxu0
  %v6441 = vadd.f32 0.0, %v6440
  %v6442 = vpop.f32.mrb[0].mxu0
  %6443 = vmatprep.mubr.f32.mxu0 0.0
  %6444 = vmatmul.mubr.f32.gmra.mrb[0].mxu0 %v6065
  %v6445 = vpop.f32.mrb[0].mxu0
  %v6446 = vadd.f32 0.0, %v6445
  %v6447 = vpop.f32.mrb[0].mxu0
  %6448 = vmatprep.mubr.f32.mxu0 0.0
  %6449 = vmatmul.mubr.f32.gmra.mrb[0].mxu0 %v6068
  %v6450 = vpop.f32.mrb[0].mxu0
  %v6451 = vadd.f32 0.0, %v6450
  %v6452 = vpop.f32.mrb[0].mxu0
  %6453 = vmatprep.mubr.f32.mxu0 0.0
  %6454 = vmatmul.mubr.f32.gmra.mrb[0].mxu0 %v6071
  %v6455 = vpop.f32.mrb[0].mxu0
  %v6456 = vadd.f32 0.0, %v6455
  %v6457 = vpop.f32.mrb[0].mxu0
  %6458 = vmatprep.mubr.f32.mxu0 0.0
  %6459 = vmatmul.mubr.f32.gmra.mrb[0].mxu0 %v6074
  %v6460 = vpop.f32.mrb[0].mxu0
  %v6461 = vadd.f32 0.0, %v6460
  %v6462 = vpop.f32.mrb[0].mxu0
  %6463 = vdwg.mxu0
  %v6464 = vadd.f32 %v5754, %v6146
  %v6465 = vadd.f32 %v5755, %v6151
  %v6466 = vadd.f32 %v5756, %v6156
  %v6467 = vadd.f32 %v5757, %v6161
  %v6468 = vadd.f32 %v5758, %v6166
  %v6469 = vadd.f32 %v5759, %v6171
  %v6470 = vadd.f32 %v5760, %v6176
  %v6471 = vadd.f32 %v5761, %v6181
  %v6472 = vadd.f32 %v5762, %v6186
  %v6473 = vadd.f32 %v5763, %v6191
  %v6474 = vadd.f32 %v5764, %v6196
  %v6475 = vadd.f32 %v5765, %v6201
  %v6476 = vadd.f32 %v5766, %v6206
  %v6477 = vadd.f32 %v5767, %v6211
  %v6478 = vadd.f32 %v5768, %v6216
  %v6479 = vadd.f32 %v5769, %v6221
  %v6480 = vadd.f32 %v5770, %v6226
  %v6481 = vadd.f32 %v5771, %v6231
  %v6482 = vadd.f32 %v5772, %v6236
  %v6483 = vadd.f32 %v5773, %v6241
  %v6484 = vadd.f32 %v5774, %v6246
  %v6485 = vadd.f32 %v5775, %v6251
  %v6486 = vadd.f32 %v5776, %v6256
  %v6487 = vadd.f32 %v5777, %v6261
  %v6488 = vadd.f32 %v5778, %v6266
  %v6489 = vadd.f32 %v5779, %v6271
  %v6490 = vadd.f32 %v5780, %v6276
  %v6491 = vadd.f32 %v5781, %v6281
  %v6492 = vadd.f32 %v5782, %v6286
  %v6493 = vadd.f32 %v5783, %v6291
  %v6494 = vadd.f32 %v5784, %v6296
  %v6495 = vadd.f32 %v5785, %v6301
  %v6496 = vadd.f32 %v5786, %v6306
  %v6497 = vadd.f32 %v5787, %v6311
  %v6498 = vadd.f32 %v5788, %v6316
  %v6499 = vadd.f32 %v5789, %v6321
  %v6500 = vadd.f32 %v5790, %v6326
  %v6501 = vadd.f32 %v5791, %v6331
  %v6502 = vadd.f32 %v5792, %v6336
  %v6503 = vadd.f32 %v5793, %v6341
  %v6504 = vadd.f32 %v5794, %v6346
  %v6505 = vadd.f32 %v5795, %v6351
  %v6506 = vadd.f32 %v5796, %v6356
  %v6507 = vadd.f32 %v5797, %v6361
  %v6508 = vadd.f32 %v5798, %v6366
  %v6509 = vadd.f32 %v5799, %v6371
  %v6510 = vadd.f32 %v5800, %v6376
  %v6511 = vadd.f32 %v5801, %v6381
  %v6512 = vadd.f32 %v5802, %v6386
  %v6513 = vadd.f32 %v5803, %v6391
  %v6514 = vadd.f32 %v5804, %v6396
  %v6515 = vadd.f32 %v5805, %v6401
  %v6516 = vadd.f32 %v5806, %v6406
  %v6517 = vadd.f32 %v5807, %v6411
  %v6518 = vadd.f32 %v5808, %v6416
  %v6519 = vadd.f32 %v5809, %v6421
  %v6520 = vadd.f32 %v5810, %v6426
  %v6521 = vadd.f32 %v5811, %v6431
  %v6522 = vadd.f32 %v5812, %v6436
  %v6523 = vadd.f32 %v5813, %v6441
  %v6524 = vadd.f32 %v5814, %v6446
  %v6525 = vadd.f32 %v5815, %v6451
  %v6526 = vadd.f32 %v5816, %v6456
  %v6527 = vadd.f32 %v5817, %v6461
  %v6528 = vld [vmem:[%s2] sm:$0x1]
  %v6529 = vld [vmem:[%s3] sm:$0x1]
  %v6530 = vsel %vm26, %v6464, 0.0
  %v6531 = vsel %vm26, %v6465, 0.0
  %v6532 = vadd.f32 %v6530, %v6531
  %v6533 = vsel %vm26, %v6466, 0.0
  %v6534 = vadd.f32 %v6532, %v6533
  %v6535 = vsel %vm26, %v6467, 0.0
  %v6536 = vadd.f32 %v6534, %v6535
  %v6537 = vsel %vm26, %v6468, 0.0
  %v6538 = vadd.f32 %v6536, %v6537
  %v6539 = vsel %vm26, %v6469, 0.0
  %v6540 = vadd.f32 %v6538, %v6539
  %v6541 = vsel %vm26, %v6470, 0.0
  %v6542 = vadd.f32 %v6540, %v6541
  %v6543 = vsel %vm26, %v6471, 0.0
  %v6544 = vadd.f32 %v6542, %v6543
  %v6545 = vsel %vm26, %v6472, 0.0
  %v6546 = vadd.f32 %v6544, %v6545
  %v6547 = vsel %vm26, %v6473, 0.0
  %v6548 = vadd.f32 %v6546, %v6547
  %v6549 = vsel %vm26, %v6474, 0.0
  %v6550 = vadd.f32 %v6548, %v6549
  %v6551 = vsel %vm26, %v6475, 0.0
  %v6552 = vadd.f32 %v6550, %v6551
  %v6553 = vsel %vm26, %v6476, 0.0
  %v6554 = vadd.f32 %v6552, %v6553
  %v6555 = vsel %vm26, %v6477, 0.0
  %v6556 = vadd.f32 %v6554, %v6555
  %v6557 = vsel %vm26, %v6478, 0.0
  %v6558 = vadd.f32 %v6556, %v6557
  %v6559 = vsel %vm26, %v6479, 0.0
  %v6560 = vadd.f32 %v6558, %v6559
  %v6561 = vsel %vm26, %v6480, 0.0
  %v6562 = vadd.f32 %v6560, %v6561
  %v6563 = vsel %vm26, %v6481, 0.0
  %v6564 = vadd.f32 %v6562, %v6563
  %v6565 = vsel %vm26, %v6482, 0.0
  %v6566 = vadd.f32 %v6564, %v6565
  %v6567 = vsel %vm26, %v6483, 0.0
  %v6568 = vadd.f32 %v6566, %v6567
  %v6569 = vsel %vm26, %v6484, 0.0
  %v6570 = vadd.f32 %v6568, %v6569
  %v6571 = vsel %vm26, %v6485, 0.0
  %v6572 = vadd.f32 %v6570, %v6571
  %v6573 = vsel %vm26, %v6486, 0.0
  %v6574 = vadd.f32 %v6572, %v6573
  %v6575 = vsel %vm26, %v6487, 0.0
  %v6576 = vadd.f32 %v6574, %v6575
  %v6577 = vsel %vm26, %v6488, 0.0
  %v6578 = vadd.f32 %v6576, %v6577
  %v6579 = vsel %vm26, %v6489, 0.0
  %v6580 = vadd.f32 %v6578, %v6579
  %v6581 = vsel %vm26, %v6490, 0.0
  %v6582 = vadd.f32 %v6580, %v6581
  %v6583 = vsel %vm26, %v6491, 0.0
  %v6584 = vadd.f32 %v6582, %v6583
  %v6585 = vsel %vm26, %v6492, 0.0
  %v6586 = vadd.f32 %v6584, %v6585
  %v6587 = vsel %vm26, %v6493, 0.0
  %v6588 = vadd.f32 %v6586, %v6587
  %v6589 = vsel %vm26, %v6494, 0.0
  %v6590 = vadd.f32 %v6588, %v6589
  %v6591 = vsel %vm26, %v6495, 0.0
  %v6592 = vadd.f32 %v6590, %v6591
  %v6593 = vsel %vm26, %v6496, 0.0
  %v6594 = vadd.f32 %v6592, %v6593
  %v6595 = vsel %vm26, %v6497, 0.0
  %v6596 = vadd.f32 %v6594, %v6595
  %v6597 = vsel %vm26, %v6498, 0.0
  %v6598 = vadd.f32 %v6596, %v6597
  %v6599 = vsel %vm26, %v6499, 0.0
  %v6600 = vadd.f32 %v6598, %v6599
  %v6601 = vsel %vm26, %v6500, 0.0
  %v6602 = vadd.f32 %v6600, %v6601
  %v6603 = vsel %vm26, %v6501, 0.0
  %v6604 = vadd.f32 %v6602, %v6603
  %v6605 = vsel %vm26, %v6502, 0.0
  %v6606 = vadd.f32 %v6604, %v6605
  %v6607 = vsel %vm26, %v6503, 0.0
  %v6608 = vadd.f32 %v6606, %v6607
  %v6609 = vsel %vm26, %v6504, 0.0
  %v6610 = vadd.f32 %v6608, %v6609
  %v6611 = vsel %vm26, %v6505, 0.0
  %v6612 = vadd.f32 %v6610, %v6611
  %v6613 = vsel %vm26, %v6506, 0.0
  %v6614 = vadd.f32 %v6612, %v6613
  %v6615 = vsel %vm26, %v6507, 0.0
  %v6616 = vadd.f32 %v6614, %v6615
  %v6617 = vsel %vm26, %v6508, 0.0
  %v6618 = vadd.f32 %v6616, %v6617
  %v6619 = vsel %vm26, %v6509, 0.0
  %v6620 = vadd.f32 %v6618, %v6619
  %v6621 = vsel %vm26, %v6510, 0.0
  %v6622 = vadd.f32 %v6620, %v6621
  %v6623 = vsel %vm26, %v6511, 0.0
  %v6624 = vadd.f32 %v6622, %v6623
  %v6625 = vsel %vm26, %v6512, 0.0
  %v6626 = vadd.f32 %v6624, %v6625
  %v6627 = vsel %vm26, %v6513, 0.0
  %v6628 = vadd.f32 %v6626, %v6627
  %v6629 = vsel %vm26, %v6514, 0.0
  %v6630 = vadd.f32 %v6628, %v6629
  %v6631 = vsel %vm26, %v6515, 0.0
  %v6632 = vadd.f32 %v6630, %v6631
  %v6633 = vsel %vm26, %v6516, 0.0
  %v6634 = vadd.f32 %v6632, %v6633
  %v6635 = vsel %vm26, %v6517, 0.0
  %v6636 = vadd.f32 %v6634, %v6635
  %v6637 = vsel %vm26, %v6518, 0.0
  %v6638 = vadd.f32 %v6636, %v6637
  %v6639 = vsel %vm26, %v6519, 0.0
  %v6640 = vadd.f32 %v6638, %v6639
  %v6641 = vsel %vm26, %v6520, 0.0
  %v6642 = vadd.f32 %v6640, %v6641
  %v6643 = vsel %vm26, %v6521, 0.0
  %v6644 = vadd.f32 %v6642, %v6643
  %v6645 = vsel %vm26, %v6522, 0.0
  %v6646 = vadd.f32 %v6644, %v6645
  %v6647 = vsel %vm26, %v6523, 0.0
  %v6648 = vadd.f32 %v6646, %v6647
  %v6649 = vsel %vm26, %v6524, 0.0
  %v6650 = vadd.f32 %v6648, %v6649
  %v6651 = vsel %vm26, %v6525, 0.0
  %v6652 = vadd.f32 %v6650, %v6651
  %v6653 = vsel %vm26, %v6526, 0.0
  %v6654 = vadd.f32 %v6652, %v6653
  %v6655 = vsel %vm26, %v6527, 0.0
  %v6656 = vadd.f32 %v6654, %v6655
  %v6657 = vrot.slane %v6656, 4
  %v6658 = vadd.f32 %v6656, %v6657
  %v6659 = vrot.slane %v6658, 2
  %v6660 = vadd.f32 %v6658, %v6659
  %v6661 = vrot.slane %v6660, 1
  %v6662 = vadd.f32 %v6660, %v6661
  %v6663 = vmul.f32 %v6464, %v6464
  %v6664 = vmul.f32 %v6465, %v6465
  %v6665 = vmul.f32 %v6466, %v6466
  %v6666 = vmul.f32 %v6467, %v6467
  %v6667 = vmul.f32 %v6468, %v6468
  %v6668 = vmul.f32 %v6469, %v6469
  %v6669 = vmul.f32 %v6470, %v6470
  %v6670 = vmul.f32 %v6471, %v6471
  %v6671 = vmul.f32 %v6472, %v6472
  %v6672 = vmul.f32 %v6473, %v6473
  %v6673 = vmul.f32 %v6474, %v6474
  %v6674 = vmul.f32 %v6475, %v6475
  %v6675 = vmul.f32 %v6476, %v6476
  %v6676 = vmul.f32 %v6477, %v6477
  %v6677 = vmul.f32 %v6478, %v6478
  %v6678 = vmul.f32 %v6479, %v6479
  %v6679 = vmul.f32 %v6480, %v6480
  %v6680 = vmul.f32 %v6481, %v6481
  %v6681 = vmul.f32 %v6482, %v6482
  %v6682 = vmul.f32 %v6483, %v6483
  %v6683 = vmul.f32 %v6484, %v6484
  %v6684 = vmul.f32 %v6485, %v6485
  %v6685 = vmul.f32 %v6486, %v6486
  %v6686 = vmul.f32 %v6487, %v6487
  %v6687 = vmul.f32 %v6488, %v6488
  %v6688 = vmul.f32 %v6489, %v6489
  %v6689 = vmul.f32 %v6490, %v6490
  %v6690 = vmul.f32 %v6491, %v6491
  %v6691 = vmul.f32 %v6492, %v6492
  %v6692 = vmul.f32 %v6493, %v6493
  %v6693 = vmul.f32 %v6494, %v6494
  %v6694 = vmul.f32 %v6495, %v6495
  %v6695 = vmul.f32 %v6496, %v6496
  %v6696 = vmul.f32 %v6497, %v6497
  %v6697 = vmul.f32 %v6498, %v6498
  %v6698 = vmul.f32 %v6499, %v6499
  %v6699 = vmul.f32 %v6500, %v6500
  %v6700 = vmul.f32 %v6501, %v6501
  %v6701 = vmul.f32 %v6502, %v6502
  %v6702 = vmul.f32 %v6503, %v6503
  %v6703 = vmul.f32 %v6504, %v6504
  %v6704 = vmul.f32 %v6505, %v6505
  %v6705 = vmul.f32 %v6506, %v6506
  %v6706 = vmul.f32 %v6507, %v6507
  %v6707 = vmul.f32 %v6508, %v6508
  %v6708 = vmul.f32 %v6509, %v6509
  %v6709 = vmul.f32 %v6510, %v6510
  %v6710 = vmul.f32 %v6511, %v6511
  %v6711 = vmul.f32 %v6512, %v6512
  %v6712 = vmul.f32 %v6513, %v6513
  %v6713 = vmul.f32 %v6514, %v6514
  %v6714 = vmul.f32 %v6515, %v6515
  %v6715 = vmul.f32 %v6516, %v6516
  %v6716 = vmul.f32 %v6517, %v6517
  %v6717 = vmul.f32 %v6518, %v6518
  %v6718 = vmul.f32 %v6519, %v6519
  %v6719 = vmul.f32 %v6520, %v6520
  %v6720 = vmul.f32 %v6521, %v6521
  %v6721 = vmul.f32 %v6522, %v6522
  %v6722 = vmul.f32 %v6523, %v6523
  %v6723 = vmul.f32 %v6524, %v6524
  %v6724 = vmul.f32 %v6525, %v6525
  %v6725 = vmul.f32 %v6526, %v6526
  %v6726 = vmul.f32 %v6527, %v6527
  %v6727 = vsel %vm26, %v6663, 0.0
  %v6728 = vsel %vm26, %v6664, 0.0
  %v6729 = vadd.f32 %v6727, %v6728
  %v6730 = vsel %vm26, %v6665, 0.0
  %v6731 = vadd.f32 %v6729, %v6730
  %v6732 = vsel %vm26, %v6666, 0.0
  %v6733 = vadd.f32 %v6731, %v6732
  %v6734 = vsel %vm26, %v6667, 0.0
  %v6735 = vadd.f32 %v6733, %v6734
  %v6736 = vsel %vm26, %v6668, 0.0
  %v6737 = vadd.f32 %v6735, %v6736
  %v6738 = vsel %vm26, %v6669, 0.0
  %v6739 = vadd.f32 %v6737, %v6738
  %v6740 = vsel %vm26, %v6670, 0.0
  %v6741 = vadd.f32 %v6739, %v6740
  %v6742 = vsel %vm26, %v6671, 0.0
  %v6743 = vadd.f32 %v6741, %v6742
  %v6744 = vsel %vm26, %v6672, 0.0
  %v6745 = vadd.f32 %v6743, %v6744
  %v6746 = vsel %vm26, %v6673, 0.0
  %v6747 = vadd.f32 %v6745, %v6746
  %v6748 = vsel %vm26, %v6674, 0.0
  %v6749 = vadd.f32 %v6747, %v6748
  %v6750 = vsel %vm26, %v6675, 0.0
  %v6751 = vadd.f32 %v6749, %v6750
  %v6752 = vsel %vm26, %v6676, 0.0
  %v6753 = vadd.f32 %v6751, %v6752
  %v6754 = vsel %vm26, %v6677, 0.0
  %v6755 = vadd.f32 %v6753, %v6754
  %v6756 = vsel %vm26, %v6678, 0.0
  %v6757 = vadd.f32 %v6755, %v6756
  %v6758 = vsel %vm26, %v6679, 0.0
  %v6759 = vadd.f32 %v6757, %v6758
  %v6760 = vsel %vm26, %v6680, 0.0
  %v6761 = vadd.f32 %v6759, %v6760
  %v6762 = vsel %vm26, %v6681, 0.0
  %v6763 = vadd.f32 %v6761, %v6762
  %v6764 = vsel %vm26, %v6682, 0.0
  %v6765 = vadd.f32 %v6763, %v6764
  %v6766 = vsel %vm26, %v6683, 0.0
  %v6767 = vadd.f32 %v6765, %v6766
  %v6768 = vsel %vm26, %v6684, 0.0
  %v6769 = vadd.f32 %v6767, %v6768
  %v6770 = vsel %vm26, %v6685, 0.0
  %v6771 = vadd.f32 %v6769, %v6770
  %v6772 = vsel %vm26, %v6686, 0.0
  %v6773 = vadd.f32 %v6771, %v6772
  %v6774 = vsel %vm26, %v6687, 0.0
  %v6775 = vadd.f32 %v6773, %v6774
  %v6776 = vsel %vm26, %v6688, 0.0
  %v6777 = vadd.f32 %v6775, %v6776
  %v6778 = vsel %vm26, %v6689, 0.0
  %v6779 = vadd.f32 %v6777, %v6778
  %v6780 = vsel %vm26, %v6690, 0.0
  %v6781 = vadd.f32 %v6779, %v6780
  %v6782 = vsel %vm26, %v6691, 0.0
  %v6783 = vadd.f32 %v6781, %v6782
  %v6784 = vsel %vm26, %v6692, 0.0
  %v6785 = vadd.f32 %v6783, %v6784
  %v6786 = vsel %vm26, %v6693, 0.0
  %v6787 = vadd.f32 %v6785, %v6786
  %v6788 = vsel %vm26, %v6694, 0.0
  %v6789 = vadd.f32 %v6787, %v6788
  %v6790 = vsel %vm26, %v6695, 0.0
  %v6791 = vadd.f32 %v6789, %v6790
  %v6792 = vsel %vm26, %v6696, 0.0
  %v6793 = vadd.f32 %v6791, %v6792
  %v6794 = vsel %vm26, %v6697, 0.0
  %v6795 = vadd.f32 %v6793, %v6794
  %v6796 = vsel %vm26, %v6698, 0.0
  %v6797 = vadd.f32 %v6795, %v6796
  %v6798 = vsel %vm26, %v6699, 0.0
  %v6799 = vadd.f32 %v6797, %v6798
  %v6800 = vsel %vm26, %v6700, 0.0
  %v6801 = vadd.f32 %v6799, %v6800
  %v6802 = vsel %vm26, %v6701, 0.0
  %v6803 = vadd.f32 %v6801, %v6802
  %v6804 = vsel %vm26, %v6702, 0.0
  %v6805 = vadd.f32 %v6803, %v6804
  %v6806 = vsel %vm26, %v6703, 0.0
  %v6807 = vadd.f32 %v6805, %v6806
  %v6808 = vsel %vm26, %v6704, 0.0
  %v6809 = vadd.f32 %v6807, %v6808
  %v6810 = vsel %vm26, %v6705, 0.0
  %v6811 = vadd.f32 %v6809, %v6810
  %v6812 = vsel %vm26, %v6706, 0.0
  %v6813 = vadd.f32 %v6811, %v6812
  %v6814 = vsel %vm26, %v6707, 0.0
  %v6815 = vadd.f32 %v6813, %v6814
  %v6816 = vsel %vm26, %v6708, 0.0
  %v6817 = vadd.f32 %v6815, %v6816
  %v6818 = vsel %vm26, %v6709, 0.0
  %v6819 = vadd.f32 %v6817, %v6818
  %v6820 = vsel %vm26, %v6710, 0.0
  %v6821 = vadd.f32 %v6819, %v6820
  %v6822 = vsel %vm26, %v6711, 0.0
  %v6823 = vadd.f32 %v6821, %v6822
  %v6824 = vsel %vm26, %v6712, 0.0
  %v6825 = vadd.f32 %v6823, %v6824
  %v6826 = vsel %vm26, %v6713, 0.0
  %v6827 = vadd.f32 %v6825, %v6826
  %v6828 = vsel %vm26, %v6714, 0.0
  %v6829 = vadd.f32 %v6827, %v6828
  %v6830 = vsel %vm26, %v6715, 0.0
  %v6831 = vadd.f32 %v6829, %v6830
  %v6832 = vsel %vm26, %v6716, 0.0
  %v6833 = vadd.f32 %v6831, %v6832
  %v6834 = vsel %vm26, %v6717, 0.0
  %v6835 = vadd.f32 %v6833, %v6834
  %v6836 = vsel %vm26, %v6718, 0.0
  %v6837 = vadd.f32 %v6835, %v6836
  %v6838 = vsel %vm26, %v6719, 0.0
  %v6839 = vadd.f32 %v6837, %v6838
  %v6840 = vsel %vm26, %v6720, 0.0
  %v6841 = vadd.f32 %v6839, %v6840
  %v6842 = vsel %vm26, %v6721, 0.0
  %v6843 = vadd.f32 %v6841, %v6842
  %v6844 = vsel %vm26, %v6722, 0.0
  %v6845 = vadd.f32 %v6843, %v6844
  %v6846 = vsel %vm26, %v6723, 0.0
  %v6847 = vadd.f32 %v6845, %v6846
  %v6848 = vsel %vm26, %v6724, 0.0
  %v6849 = vadd.f32 %v6847, %v6848
  %v6850 = vsel %vm26, %v6725, 0.0
  %v6851 = vadd.f32 %v6849, %v6850
  %v6852 = vsel %vm26, %v6726, 0.0
  %v6853 = vadd.f32 %v6851, %v6852
  %v6854 = vrot.slane %v6853, 4
  %v6855 = vadd.f32 %v6853, %v6854
  %v6856 = vrot.slane %v6855, 2
  %v6857 = vadd.f32 %v6855, %v6856
  %v6858 = vrot.slane %v6857, 1
  %v6859 = vadd.f32 %v6857, %v6858
  %v6860 = vmul.f32 %v6662, 0.001953125
  %v6861 = vmul.f32 %v6859, 0.001953125
  %v6862 = vmul.f32 %v6860, %v6860
  %v6863 = vsub.f32 %v6861, %v6862
  %v6864 = vadd.f32 %v6863, 1e-05
  %v6865 = vrsqrt.pop %v6864
  %v6866 = vmul.f32 %v6528, %v6865
  %v6867 = vmul.f32 %v6860, %v6866
  %v6868 = vsub.f32 %v6529, %v6867
  %v6870 = vlaneseq
  %v6871 = vshrl.u32 %v6870, 7
  %v6872 = vsub.s32 0, %v6871
  %v6873 = vrot.slane %v6866, %v6872
  %v6875 = vmul.f32 %v6464, %v6873
  %v6876 = vmul.f32 %v6465, %v6873
  %v6877 = vmul.f32 %v6466, %v6873
  %v6878 = vmul.f32 %v6467, %v6873
  %v6879 = vmul.f32 %v6468, %v6873
  %v6880 = vmul.f32 %v6469, %v6873
  %v6881 = vmul.f32 %v6470, %v6873
  %v6882 = vmul.f32 %v6471, %v6873
  %v6883 = vmul.f32 %v6472, %v6873
  %v6884 = vmul.f32 %v6473, %v6873
  %v6885 = vmul.f32 %v6474, %v6873
  %v6886 = vmul.f32 %v6475, %v6873
  %v6887 = vmul.f32 %v6476, %v6873
  %v6888 = vmul.f32 %v6477, %v6873
  %v6889 = vmul.f32 %v6478, %v6873
  %v6890 = vmul.f32 %v6479, %v6873
  %v6891 = vmul.f32 %v6480, %v6873
  %v6892 = vmul.f32 %v6481, %v6873
  %v6893 = vmul.f32 %v6482, %v6873
  %v6894 = vmul.f32 %v6483, %v6873
  %v6895 = vmul.f32 %v6484, %v6873
  %v6896 = vmul.f32 %v6485, %v6873
  %v6897 = vmul.f32 %v6486, %v6873
  %v6898 = vmul.f32 %v6487, %v6873
  %v6899 = vmul.f32 %v6488, %v6873
  %v6900 = vmul.f32 %v6489, %v6873
  %v6901 = vmul.f32 %v6490, %v6873
  %v6902 = vmul.f32 %v6491, %v6873
  %v6903 = vmul.f32 %v6492, %v6873
  %v6904 = vmul.f32 %v6493, %v6873
  %v6905 = vmul.f32 %v6494, %v6873
  %v6906 = vmul.f32 %v6495, %v6873
  %v6907 = vmul.f32 %v6496, %v6873
  %v6908 = vmul.f32 %v6497, %v6873
  %v6909 = vmul.f32 %v6498, %v6873
  %v6910 = vmul.f32 %v6499, %v6873
  %v6911 = vmul.f32 %v6500, %v6873
  %v6912 = vmul.f32 %v6501, %v6873
  %v6913 = vmul.f32 %v6502, %v6873
  %v6914 = vmul.f32 %v6503, %v6873
  %v6915 = vmul.f32 %v6504, %v6873
  %v6916 = vmul.f32 %v6505, %v6873
  %v6917 = vmul.f32 %v6506, %v6873
  %v6918 = vmul.f32 %v6507, %v6873
  %v6919 = vmul.f32 %v6508, %v6873
  %v6920 = vmul.f32 %v6509, %v6873
  %v6921 = vmul.f32 %v6510, %v6873
  %v6922 = vmul.f32 %v6511, %v6873
  %v6923 = vmul.f32 %v6512, %v6873
  %v6924 = vmul.f32 %v6513, %v6873
  %v6925 = vmul.f32 %v6514, %v6873
  %v6926 = vmul.f32 %v6515, %v6873
  %v6927 = vmul.f32 %v6516, %v6873
  %v6928 = vmul.f32 %v6517, %v6873
  %v6929 = vmul.f32 %v6518, %v6873
  %v6930 = vmul.f32 %v6519, %v6873
  %v6931 = vmul.f32 %v6520, %v6873
  %v6932 = vmul.f32 %v6521, %v6873
  %v6933 = vmul.f32 %v6522, %v6873
  %v6934 = vmul.f32 %v6523, %v6873
  %v6935 = vmul.f32 %v6524, %v6873
  %v6936 = vmul.f32 %v6525, %v6873
  %v6937 = vmul.f32 %v6526, %v6873
  %v6938 = vmul.f32 %v6527, %v6873
  %v6940 = vlaneseq
  %v6941 = vshrl.u32 %v6940, 7
  %v6942 = vsub.s32 0, %v6941
  %v6943 = vrot.slane %v6868, %v6942
  %v6945 = vadd.f32 %v6875, %v6943
  %v6946 = vadd.f32 %v6876, %v6943
  %v6947 = vadd.f32 %v6877, %v6943
  %v6948 = vadd.f32 %v6878, %v6943
  %v6949 = vadd.f32 %v6879, %v6943
  %v6950 = vadd.f32 %v6880, %v6943
  %v6951 = vadd.f32 %v6881, %v6943
  %v6952 = vadd.f32 %v6882, %v6943
  %v6953 = vadd.f32 %v6883, %v6943
  %v6954 = vadd.f32 %v6884, %v6943
  %v6955 = vadd.f32 %v6885, %v6943
  %v6956 = vadd.f32 %v6886, %v6943
  %v6957 = vadd.f32 %v6887, %v6943
  %v6958 = vadd.f32 %v6888, %v6943
  %v6959 = vadd.f32 %v6889, %v6943
  %v6960 = vadd.f32 %v6890, %v6943
  %v6961 = vadd.f32 %v6891, %v6943
  %v6962 = vadd.f32 %v6892, %v6943
  %v6963 = vadd.f32 %v6893, %v6943
  %v6964 = vadd.f32 %v6894, %v6943
  %v6965 = vadd.f32 %v6895, %v6943
  %v6966 = vadd.f32 %v6896, %v6943
  %v6967 = vadd.f32 %v6897, %v6943
  %v6968 = vadd.f32 %v6898, %v6943
  %v6969 = vadd.f32 %v6899, %v6943
  %v6970 = vadd.f32 %v6900, %v6943
  %v6971 = vadd.f32 %v6901, %v6943
  %v6972 = vadd.f32 %v6902, %v6943
  %v6973 = vadd.f32 %v6903, %v6943
  %v6974 = vadd.f32 %v6904, %v6943
  %v6975 = vadd.f32 %v6905, %v6943
  %v6976 = vadd.f32 %v6906, %v6943
  %v6977 = vadd.f32 %v6907, %v6943
  %v6978 = vadd.f32 %v6908, %v6943
  %v6979 = vadd.f32 %v6909, %v6943
  %v6980 = vadd.f32 %v6910, %v6943
  %v6981 = vadd.f32 %v6911, %v6943
  %v6982 = vadd.f32 %v6912, %v6943
  %v6983 = vadd.f32 %v6913, %v6943
  %v6984 = vadd.f32 %v6914, %v6943
  %v6985 = vadd.f32 %v6915, %v6943
  %v6986 = vadd.f32 %v6916, %v6943
  %v6987 = vadd.f32 %v6917, %v6943
  %v6988 = vadd.f32 %v6918, %v6943
  %v6989 = vadd.f32 %v6919, %v6943
  %v6990 = vadd.f32 %v6920, %v6943
  %v6991 = vadd.f32 %v6921, %v6943
  %v6992 = vadd.f32 %v6922, %v6943
  %v6993 = vadd.f32 %v6923, %v6943
  %v6994 = vadd.f32 %v6924, %v6943
  %v6995 = vadd.f32 %v6925, %v6943
  %v6996 = vadd.f32 %v6926, %v6943
  %v6997 = vadd.f32 %v6927, %v6943
  %v6998 = vadd.f32 %v6928, %v6943
  %v6999 = vadd.f32 %v6929, %v6943
  %v7000 = vadd.f32 %v6930, %v6943
  %v7001 = vadd.f32 %v6931, %v6943
  %v7002 = vadd.f32 %v6932, %v6943
  %v7003 = vadd.f32 %v6933, %v6943
  %v7004 = vadd.f32 %v6934, %v6943
  %v7005 = vadd.f32 %v6935, %v6943
  %v7006 = vadd.f32 %v6936, %v6943
  %v7007 = vadd.f32 %v6937, %v6943
  %v7008 = vadd.f32 %v6938, %v6943
  %v7009 = vmax.f32 %v6945, 0.0
  %v7010 = vmax.f32 %v6946, 0.0
  %v7011 = vmax.f32 %v6947, 0.0
  %v7012 = vmax.f32 %v6948, 0.0
  %v7013 = vmax.f32 %v6949, 0.0
  %v7014 = vmax.f32 %v6950, 0.0
  %v7015 = vmax.f32 %v6951, 0.0
  %v7016 = vmax.f32 %v6952, 0.0
  %v7017 = vmax.f32 %v6953, 0.0
  %v7018 = vmax.f32 %v6954, 0.0
  %v7019 = vmax.f32 %v6955, 0.0
  %v7020 = vmax.f32 %v6956, 0.0
  %v7021 = vmax.f32 %v6957, 0.0
  %v7022 = vmax.f32 %v6958, 0.0
  %v7023 = vmax.f32 %v6959, 0.0
  %v7024 = vmax.f32 %v6960, 0.0
  %v7025 = vmax.f32 %v6961, 0.0
  %v7026 = vmax.f32 %v6962, 0.0
  %v7027 = vmax.f32 %v6963, 0.0
  %v7028 = vmax.f32 %v6964, 0.0
  %v7029 = vmax.f32 %v6965, 0.0
  %v7030 = vmax.f32 %v6966, 0.0
  %v7031 = vmax.f32 %v6967, 0.0
  %v7032 = vmax.f32 %v6968, 0.0
  %v7033 = vmax.f32 %v6969, 0.0
  %v7034 = vmax.f32 %v6970, 0.0
  %v7035 = vmax.f32 %v6971, 0.0
  %v7036 = vmax.f32 %v6972, 0.0
  %v7037 = vmax.f32 %v6973, 0.0
  %v7038 = vmax.f32 %v6974, 0.0
  %v7039 = vmax.f32 %v6975, 0.0
  %v7040 = vmax.f32 %v6976, 0.0
  %v7041 = vmax.f32 %v6977, 0.0
  %v7042 = vmax.f32 %v6978, 0.0
  %v7043 = vmax.f32 %v6979, 0.0
  %v7044 = vmax.f32 %v6980, 0.0
  %v7045 = vmax.f32 %v6981, 0.0
  %v7046 = vmax.f32 %v6982, 0.0
  %v7047 = vmax.f32 %v6983, 0.0
  %v7048 = vmax.f32 %v6984, 0.0
  %v7049 = vmax.f32 %v6985, 0.0
  %v7050 = vmax.f32 %v6986, 0.0
  %v7051 = vmax.f32 %v6987, 0.0
  %v7052 = vmax.f32 %v6988, 0.0
  %v7053 = vmax.f32 %v6989, 0.0
  %v7054 = vmax.f32 %v6990, 0.0
  %v7055 = vmax.f32 %v6991, 0.0
  %v7056 = vmax.f32 %v6992, 0.0
  %v7057 = vmax.f32 %v6993, 0.0
  %v7058 = vmax.f32 %v6994, 0.0
  %v7059 = vmax.f32 %v6995, 0.0
  %v7060 = vmax.f32 %v6996, 0.0
  %v7061 = vmax.f32 %v6997, 0.0
  %v7062 = vmax.f32 %v6998, 0.0
  %v7063 = vmax.f32 %v6999, 0.0
  %v7064 = vmax.f32 %v7000, 0.0
  %v7065 = vmax.f32 %v7001, 0.0
  %v7066 = vmax.f32 %v7002, 0.0
  %v7067 = vmax.f32 %v7003, 0.0
  %v7068 = vmax.f32 %v7004, 0.0
  %v7069 = vmax.f32 %v7005, 0.0
  %v7070 = vmax.f32 %v7006, 0.0
  %v7071 = vmax.f32 %v7007, 0.0
  %v7072 = vmax.f32 %v7008, 0.0
  %7073 = vst.msk [vmem:[%s200 + $0x1] sm:$0xff] %vm26, %v7009
  %7074 = vst.msk [vmem:[%s200 + $0x9] sm:$0xff] %vm26, %v7010
  %7075 = vst.msk [vmem:[%s200 + $0x19] sm:$0xff] %vm26, %v7011
  %7076 = vst.msk [vmem:[%s200 + $0x21] sm:$0xff] %vm26, %v7012
  %7077 = vst.msk [vmem:[%s200 + $0x31] sm:$0xff] %vm26, %v7013
  %7078 = vst.msk [vmem:[%s200 + $0x39] sm:$0xff] %vm26, %v7014
  %7079 = vst.msk [vmem:[%s200 + $0x49] sm:$0xff] %vm26, %v7015
  %7080 = vst.msk [vmem:[%s200 + $0x51] sm:$0xff] %vm26, %v7016
  %7081 = vst.msk [vmem:[%s200 + $0x61] sm:$0xff] %vm26, %v7017
  %7082 = vst.msk [vmem:[%s200 + $0x69] sm:$0xff] %vm26, %v7018
  %7083 = vst.msk [vmem:[%s200 + $0x79] sm:$0xff] %vm26, %v7019
  %7084 = vst.msk [vmem:[%s200 + $0x81] sm:$0xff] %vm26, %v7020
  %7085 = vst.msk [vmem:[%s200 + $0x91] sm:$0xff] %vm26, %v7021
  %7086 = vst.msk [vmem:[%s200 + $0x99] sm:$0xff] %vm26, %v7022
  %7087 = vst.msk [vmem:[%s200 + $0xa9] sm:$0xff] %vm26, %v7023
  %7088 = vst.msk [vmem:[%s200 + $0xb1] sm:$0xff] %vm26, %v7024
  %7089 = vst.msk [vmem:[%s200 + $0xc1] sm:$0xff] %vm26, %v7025
  %7090 = vst.msk [vmem:[%s200 + $0xc9] sm:$0xff] %vm26, %v7026
  %7091 = vst.msk [vmem:[%s200 + $0xd9] sm:$0xff] %vm26, %v7027
  %7092 = vst.msk [vmem:[%s200 + $0xe1] sm:$0xff] %vm26, %v7028
  %7093 = vst.msk [vmem:[%s200 + $0xf1] sm:$0xff] %vm26, %v7029
  %7094 = vst.msk [vmem:[%s200 + $0xf9] sm:$0xff] %vm26, %v7030
  %7095 = vst.msk [vmem:[%s200 + $0x109] sm:$0xff] %vm26, %v7031
  %7096 = vst.msk [vmem:[%s200 + $0x111] sm:$0xff] %vm26, %v7032
  %7097 = vst.msk [vmem:[%s200 + $0x121] sm:$0xff] %vm26, %v7033
  %7098 = vst.msk [vmem:[%s200 + $0x129] sm:$0xff] %vm26, %v7034
  %7099 = vst.msk [vmem:[%s200 + $0x139] sm:$0xff] %vm26, %v7035
  %7100 = vst.msk [vmem:[%s200 + $0x141] sm:$0xff] %vm26, %v7036
  %7101 = vst.msk [vmem:[%s200 + $0x151] sm:$0xff] %vm26, %v7037
  %7102 = vst.msk [vmem:[%s200 + $0x159] sm:$0xff] %vm26, %v7038
  %7103 = vst.msk [vmem:[%s200 + $0x169] sm:$0xff] %vm26, %v7039
  %7104 = vst.msk [vmem:[%s200 + $0x171] sm:$0xff] %vm26, %v7040
  %7105 = vst.msk [vmem:[%s200 + $0x1b1] sm:$0xff] %vm26, %v7041
  %7106 = vst.msk [vmem:[%s200 + $0x1b9] sm:$0xff] %vm26, %v7042
  %7107 = vst.msk [vmem:[%s200 + $0x1c9] sm:$0xff] %vm26, %v7043
  %7108 = vst.msk [vmem:[%s200 + $0x1d1] sm:$0xff] %vm26, %v7044
  %7109 = vst.msk [vmem:[%s200 + $0x1e1] sm:$0xff] %vm26, %v7045
  %7110 = vst.msk [vmem:[%s200 + $0x1e9] sm:$0xff] %vm26, %v7046
  %7111 = vst.msk [vmem:[%s200 + $0x1f9] sm:$0xff] %vm26, %v7047
  %7112 = vst.msk [vmem:[%s200 + $0x201] sm:$0xff] %vm26, %v7048
  %7113 = vst.msk [vmem:[%s200 + $0x211] sm:$0xff] %vm26, %v7049
  %7114 = vst.msk [vmem:[%s200 + $0x219] sm:$0xff] %vm26, %v7050
  %7115 = vst.msk [vmem:[%s200 + $0x229] sm:$0xff] %vm26, %v7051
  %7116 = vst.msk [vmem:[%s200 + $0x231] sm:$0xff] %vm26, %v7052
  %7117 = vst.msk [vmem:[%s200 + $0x241] sm:$0xff] %vm26, %v7053
  %7118 = vst.msk [vmem:[%s200 + $0x249] sm:$0xff] %vm26, %v7054
  %7119 = vst.msk [vmem:[%s200 + $0x259] sm:$0xff] %vm26, %v7055
  %7120 = vst.msk [vmem:[%s200 + $0x261] sm:$0xff] %vm26, %v7056
  %7121 = vst.msk [vmem:[%s200 + $0x271] sm:$0xff] %vm26, %v7057
  %7122 = vst.msk [vmem:[%s200 + $0x279] sm:$0xff] %vm26, %v7058
  %7123 = vst.msk [vmem:[%s200 + $0x289] sm:$0xff] %vm26, %v7059
  %7124 = vst.msk [vmem:[%s200 + $0x291] sm:$0xff] %vm26, %v7060
  %7125 = vst.msk [vmem:[%s200 + $0x2a1] sm:$0xff] %vm26, %v7061
  %7126 = vst.msk [vmem:[%s200 + $0x2a9] sm:$0xff] %vm26, %v7062
  %7127 = vst.msk [vmem:[%s200 + $0x2b9] sm:$0xff] %vm26, %v7063
  %7128 = vst.msk [vmem:[%s200 + $0x2c1] sm:$0xff] %vm26, %v7064
  %7129 = vst.msk [vmem:[%s200 + $0x2d1] sm:$0xff] %vm26, %v7065
  %7130 = vst.msk [vmem:[%s200 + $0x2d9] sm:$0xff] %vm26, %v7066
  %7131 = vst.msk [vmem:[%s200 + $0x2e9] sm:$0xff] %vm26, %v7067
  %7132 = vst.msk [vmem:[%s200 + $0x2f1] sm:$0xff] %vm26, %v7068
  %7133 = vst.msk [vmem:[%s200 + $0x301] sm:$0xff] %vm26, %v7069
  %7134 = vst.msk [vmem:[%s200 + $0x309] sm:$0xff] %vm26, %v7070
  %7135 = vst.msk [vmem:[%s200 + $0x319] sm:$0xff] %vm26, %v7071
  %7136 = vst.msk [vmem:[%s200 + $0x321] sm:$0xff] %vm26, %v7072
  %v7137 = vld [vmem:[#allocation2] sm:$0xff]
  %v7138 = vld [vmem:[#allocation2 + $0x8] sm:$0xff]
  %v7139 = vld [vmem:[#allocation2 + $0x18] sm:$0xff]
  %v7140 = vld [vmem:[#allocation2 + $0x20] sm:$0xff]
  %v7141 = vld [vmem:[#allocation2 + $0x30] sm:$0xff]
  %v7142 = vld [vmem:[#allocation2 + $0x38] sm:$0xff]
  %v7143 = vld [vmem:[#allocation2 + $0x48] sm:$0xff]
  %v7144 = vld [vmem:[#allocation2 + $0x50] sm:$0xff]
  %v7145 = vld [vmem:[#allocation2 + $0x60] sm:$0xff]
  %v7146 = vld [vmem:[#allocation2 + $0x68] sm:$0xff]
  %v7147 = vld [vmem:[#allocation2 + $0x78] sm:$0xff]
  %v7148 = vld [vmem:[#allocation2 + $0x80] sm:$0xff]
  %v7149 = vld [vmem:[#allocation2 + $0x90] sm:$0xff]
  %v7150 = vld [vmem:[#allocation2 + $0x98] sm:$0xff]
  %v7151 = vld [vmem:[#allocation2 + $0xa8] sm:$0xff]
  %v7152 = vld [vmem:[#allocation2 + $0xb0] sm:$0xff]
  %v7153 = vld [vmem:[#allocation2 + $0xc0] sm:$0xff]
  %v7154 = vld [vmem:[#allocation2 + $0xc8] sm:$0xff]
  %v7155 = vld [vmem:[#allocation2 + $0xd8] sm:$0xff]
  %v7156 = vld [vmem:[#allocation2 + $0xe0] sm:$0xff]
  %v7157 = vld [vmem:[#allocation2 + $0xf0] sm:$0xff]
  %v7158 = vld [vmem:[#allocation2 + $0xf8] sm:$0xff]
  %v7159 = vld [vmem:[#allocation2 + $0x108] sm:$0xff]
  %v7160 = vld [vmem:[#allocation2 + $0x110] sm:$0xff]
  %v7161 = vld [vmem:[#allocation2 + $0x120] sm:$0xff]
  %v7162 = vld [vmem:[#allocation2 + $0x128] sm:$0xff]
  %v7163 = vld [vmem:[#allocation2 + $0x138] sm:$0xff]
  %v7164 = vld [vmem:[#allocation2 + $0x140] sm:$0xff]
  %v7165 = vld [vmem:[#allocation2 + $0x150] sm:$0xff]
  %v7166 = vld [vmem:[#allocation2 + $0x158] sm:$0xff]
  %v7167 = vld [vmem:[#allocation2 + $0x168] sm:$0xff]
  %v7168 = vld [vmem:[#allocation2 + $0x170] sm:$0xff]
  %v7169 = vld [vmem:[#allocation2 + $0x1b0] sm:$0xff]
  %v7170 = vld [vmem:[#allocation2 + $0x1b8] sm:$0xff]
  %v7171 = vld [vmem:[#allocation2 + $0x1c8] sm:$0xff]
  %v7172 = vld [vmem:[#allocation2 + $0x1d0] sm:$0xff]
  %v7173 = vld [vmem:[#allocation2 + $0x1e0] sm:$0xff]
  %v7174 = vld [vmem:[#allocation2 + $0x1e8] sm:$0xff]
  %v7175 = vld [vmem:[#allocation2 + $0x1f8] sm:$0xff]
  %v7176 = vld [vmem:[#allocation2 + $0x200] sm:$0xff]
  %v7177 = vld [vmem:[#allocation2 + $0x210] sm:$0xff]
  %v7178 = vld [vmem:[#allocation2 + $0x218] sm:$0xff]
  %v7179 = vld [vmem:[#allocation2 + $0x228] sm:$0xff]
  %v7180 = vld [vmem:[#allocation2 + $0x230] sm:$0xff]
  %v7181 = vld [vmem:[#allocation2 + $0x240] sm:$0xff]
  %v7182 = vld [vmem:[#allocation2 + $0x248] sm:$0xff]
  %v7183 = vld [vmem:[#allocation2 + $0x258] sm:$0xff]
  %v7184 = vld [vmem:[#allocation2 + $0x260] sm:$0xff]
  %v7185 = vld [vmem:[#allocation2 + $0x270] sm:$0xff]
  %v7186 = vld [vmem:[#allocation2 + $0x278] sm:$0xff]
  %v7187 = vld [vmem:[#allocation2 + $0x288] sm:$0xff]
  %v7188 = vld [vmem:[#allocation2 + $0x290] sm:$0xff]
  %v7189 = vld [vmem:[#allocation2 + $0x2a0] sm:$0xff]
  %v7190 = vld [vmem:[#allocation2 + $0x2a8] sm:$0xff]
  %v7191 = vld [vmem:[#allocation2 + $0x2b8] sm:$0xff]
  %v7192 = vld [vmem:[#allocation2 + $0x2c0] sm:$0xff]
  %v7193 = vld [vmem:[#allocation2 + $0x2d0] sm:$0xff]
  %v7194 = vld [vmem:[#allocation2 + $0x2d8] sm:$0xff]
  %v7195 = vld [vmem:[#allocation2 + $0x2e8] sm:$0xff]
  %v7196 = vld [vmem:[#allocation2 + $0x2f0] sm:$0xff]
  %v7197 = vld [vmem:[#allocation2 + $0x300] sm:$0xff]
  %v7198 = vld [vmem:[#allocation2 + $0x308] sm:$0xff]
  %v7199 = vld [vmem:[#allocation2 + $0x318] sm:$0xff]
  %v7200 = vld [vmem:[#allocation2 + $0x320] sm:$0xff]
  %v7201 = vld [vmem:[%s4] sm:$0xf]
  %v7202 = vld [vmem:[#allocation2 + $0x1] sm:$0xff]
  %v7203 = vld [vmem:[#allocation2 + $0x9] sm:$0xff]
  %v7204 = vld [vmem:[#allocation2 + $0x19] sm:$0xff]
  %v7205 = vld [vmem:[#allocation2 + $0x21] sm:$0xff]
  %v7206 = vld [vmem:[#allocation2 + $0x31] sm:$0xff]
  %v7207 = vld [vmem:[#allocation2 + $0x39] sm:$0xff]
  %v7208 = vld [vmem:[#allocation2 + $0x49] sm:$0xff]
  %v7209 = vld [vmem:[#allocation2 + $0x51] sm:$0xff]
  %v7210 = vld [vmem:[#allocation2 + $0x61] sm:$0xff]
  %v7211 = vld [vmem:[#allocation2 + $0x69] sm:$0xff]
  %v7212 = vld [vmem:[#allocation2 + $0x79] sm:$0xff]
  %v7213 = vld [vmem:[#allocation2 + $0x81] sm:$0xff]
  %v7214 = vld [vmem:[#allocation2 + $0x91] sm:$0xff]
  %v7215 = vld [vmem:[#allocation2 + $0x99] sm:$0xff]
  %v7216 = vld [vmem:[#allocation2 + $0xa9] sm:$0xff]
  %v7217 = vld [vmem:[#allocation2 + $0xb1] sm:$0xff]
  %v7218 = vld [vmem:[#allocation2 + $0xc1] sm:$0xff]
  %v7219 = vld [vmem:[#allocation2 + $0xc9] sm:$0xff]
  %v7220 = vld [vmem:[#allocation2 + $0xd9] sm:$0xff]
  %v7221 = vld [vmem:[#allocation2 + $0xe1] sm:$0xff]
  %v7222 = vld [vmem:[#allocation2 + $0xf1] sm:$0xff]
  %v7223 = vld [vmem:[#allocation2 + $0xf9] sm:$0xff]
  %v7224 = vld [vmem:[#allocation2 + $0x109] sm:$0xff]
  %v7225 = vld [vmem:[#allocation2 + $0x111] sm:$0xff]
  %v7226 = vld [vmem:[#allocation2 + $0x121] sm:$0xff]
  %v7227 = vld [vmem:[#allocation2 + $0x129] sm:$0xff]
  %v7228 = vld [vmem:[#allocation2 + $0x139] sm:$0xff]
  %v7229 = vld [vmem:[#allocation2 + $0x141] sm:$0xff]
  %v7230 = vld [vmem:[#allocation2 + $0x151] sm:$0xff]
  %v7231 = vld [vmem:[#allocation2 + $0x159] sm:$0xff]
  %v7232 = vld [vmem:[#allocation2 + $0x169] sm:$0xff]
  %v7233 = vld [vmem:[#allocation2 + $0x171] sm:$0xff]
  %v7234 = vld [vmem:[#allocation2 + $0x1b1] sm:$0xff]
  %v7235 = vld [vmem:[#allocation2 + $0x1b9] sm:$0xff]
  %v7236 = vld [vmem:[#allocation2 + $0x1c9] sm:$0xff]
  %v7237 = vld [vmem:[#allocation2 + $0x1d1] sm:$0xff]
  %v7238 = vld [vmem:[#allocation2 + $0x1e1] sm:$0xff]
  %v7239 = vld [vmem:[#allocation2 + $0x1e9] sm:$0xff]
  %v7240 = vld [vmem:[#allocation2 + $0x1f9] sm:$0xff]
  %v7241 = vld [vmem:[#allocation2 + $0x201] sm:$0xff]
  %v7242 = vld [vmem:[#allocation2 + $0x211] sm:$0xff]
  %v7243 = vld [vmem:[#allocation2 + $0x219] sm:$0xff]
  %v7244 = vld [vmem:[#allocation2 + $0x229] sm:$0xff]
  %v7245 = vld [vmem:[#allocation2 + $0x231] sm:$0xff]
  %v7246 = vld [vmem:[#allocation2 + $0x241] sm:$0xff]
  %v7247 = vld [vmem:[#allocation2 + $0x249] sm:$0xff]
  %v7248 = vld [vmem:[#allocation2 + $0x259] sm:$0xff]
  %v7249 = vld [vmem:[#allocation2 + $0x261] sm:$0xff]
  %v7250 = vld [vmem:[#allocation2 + $0x271] sm:$0xff]
  %v7251 = vld [vmem:[#allocation2 + $0x279] sm:$0xff]
  %v7252 = vld [vmem:[#allocation2 + $0x289] sm:$0xff]
  %v7253 = vld [vmem:[#allocation2 + $0x291] sm:$0xff]
  %v7254 = vld [vmem:[#allocation2 + $0x2a1] sm:$0xff]
  %v7255 = vld [vmem:[#allocation2 + $0x2a9] sm:$0xff]
  %v7256 = vld [vmem:[#allocation2 + $0x2b9] sm:$0xff]
  %v7257 = vld [vmem:[#allocation2 + $0x2c1] sm:$0xff]
  %v7258 = vld [vmem:[#allocation2 + $0x2d1] sm:$0xff]
  %v7259 = vld [vmem:[#allocation2 + $0x2d9] sm:$0xff]
  %v7260 = vld [vmem:[#allocation2 + $0x2e9] sm:$0xff]
  %v7261 = vld [vmem:[#allocation2 + $0x2f1] sm:$0xff]
  %v7262 = vld [vmem:[#allocation2 + $0x301] sm:$0xff]
  %v7263 = vld [vmem:[#allocation2 + $0x309] sm:$0xff]
  %v7264 = vld [vmem:[#allocation2 + $0x319] sm:$0xff]
  %v7265 = vld [vmem:[#allocation2 + $0x321] sm:$0xff]
  %s7266 = scalar_lea.vmem %s4, 4
  %v7267 = vld [vmem:[%s7266] sm:$0xf]
  %v7269 = vsel %vm26, %v7202, 0
  %v7272 = vsel %vm26, %v7203, 0
  %v7275 = vsel %vm26, %v7204, 0
  %v7278 = vsel %vm26, %v7205, 0
  %v7281 = vsel %vm26, %v7206, 0
  %v7284 = vsel %vm26, %v7207, 0
  %v7287 = vsel %vm26, %v7208, 0
  %v7290 = vsel %vm26, %v7209, 0
  %v7293 = vsel %vm26, %v7210, 0
  %v7296 = vsel %vm26, %v7211, 0
  %v7299 = vsel %vm26, %v7212, 0
  %v7302 = vsel %vm26, %v7213, 0
  %v7305 = vsel %vm26, %v7214, 0
  %v7308 = vsel %vm26, %v7215, 0
  %v7311 = vsel %vm26, %v7216, 0
  %v7314 = vsel %vm26, %v7217, 0
  %v7317 = vsel %vm26, %v7218, 0
  %v7320 = vsel %vm26, %v7219, 0
  %v7323 = vsel %vm26, %v7220, 0
  %v7326 = vsel %vm26, %v7221, 0
  %v7329 = vsel %vm26, %v7222, 0
  %v7332 = vsel %vm26, %v7223, 0
  %v7335 = vsel %vm26, %v7224, 0
  %v7338 = vsel %vm26, %v7225, 0
  %v7341 = vsel %vm26, %v7226, 0
  %v7344 = vsel %vm26, %v7227, 0
  %v7347 = vsel %vm26, %v7228, 0
  %v7350 = vsel %vm26, %v7229, 0
  %v7353 = vsel %vm26, %v7230, 0
  %v7356 = vsel %vm26, %v7231, 0
  %v7359 = vsel %vm26, %v7232, 0
  %v7362 = vsel %vm26, %v7233, 0
  %v7365 = vsel %vm26, %v7234, 0
  %v7368 = vsel %vm26, %v7235, 0
  %v7371 = vsel %vm26, %v7236, 0
  %v7374 = vsel %vm26, %v7237, 0
  %v7377 = vsel %vm26, %v7238, 0
  %v7380 = vsel %vm26, %v7239, 0
  %v7383 = vsel %vm26, %v7240, 0
  %v7386 = vsel %vm26, %v7241, 0
  %v7389 = vsel %vm26, %v7242, 0
  %v7392 = vsel %vm26, %v7243, 0
  %v7395 = vsel %vm26, %v7244, 0
  %v7398 = vsel %vm26, %v7245, 0
  %v7401 = vsel %vm26, %v7246, 0
  %v7404 = vsel %vm26, %v7247, 0
  %v7407 = vsel %vm26, %v7248, 0
  %v7410 = vsel %vm26, %v7249, 0
  %v7413 = vsel %vm26, %v7250, 0
  %v7416 = vsel %vm26, %v7251, 0
  %v7419 = vsel %vm26, %v7252, 0
  %v7422 = vsel %vm26, %v7253, 0
  %v7425 = vsel %vm26, %v7254, 0
  %v7428 = vsel %vm26, %v7255, 0
  %v7431 = vsel %vm26, %v7256, 0
  %v7434 = vsel %vm26, %v7257, 0
  %v7437 = vsel %vm26, %v7258, 0
  %v7440 = vsel %vm26, %v7259, 0
  %v7443 = vsel %vm26, %v7260, 0
  %v7446 = vsel %vm26, %v7261, 0
  %v7449 = vsel %vm26, %v7262, 0
  %v7452 = vsel %vm26, %v7263, 0
  %v7455 = vsel %vm26, %v7264, 0
  %v7458 = vsel %vm26, %v7265, 0
  %v7461 = vsel %vm588, %v7267, 0
  %7463 = vmatprep.subr.mxu0 0.0
  %7464 = vmatpush1.msra.mxu0 %v7461
  %7465 = vmatprep.subr.mxu0 0.0
  %7466 = vmatpush1.msra.mxu0 0.0
  %7467 = vmatprep.subr.mxu0 0.0
  %7468 = vmatpush1.msra.mxu0 0.0
  %7469 = vmatprep.subr.mxu0 0.0
  %7470 = vmatpush1.msra.mxu0 0.0
  %7471 = vmatprep.subr.mxu0 0.0
  %7472 = vmatpush1.msra.mxu0 0.0
  %7473 = vmatprep.subr.mxu0 0.0
  %7474 = vmatpush1.msra.mxu0 0.0
  %7475 = vmatprep.subr.mxu0 0.0
  %7476 = vmatpush1.msra.mxu0 0.0
  %7477 = vmatprep.subr.mxu0 0.0
  %7478 = vmatpush1.msra.mxu0 0.0
  %7479 = vmatprep.subr.mxu0 0.0
  %7480 = vmatpush1.msra.mxu0 0.0
  %7481 = vmatprep.subr.mxu0 0.0
  %7482 = vmatpush1.msra.mxu0 0.0
  %7483 = vmatprep.subr.mxu0 0.0
  %7484 = vmatpush1.msra.mxu0 0.0
  %7485 = vmatprep.subr.mxu0 0.0
  %7486 = vmatpush1.msra.mxu0 0.0
  %7487 = vmatprep.subr.mxu0 0.0
  %7488 = vmatpush1.msra.mxu0 0.0
  %7489 = vmatprep.subr.mxu0 0.0
  %7490 = vmatpush1.msra.mxu0 0.0
  %7491 = vmatprep.subr.mxu0 0.0
  %7492 = vmatpush1.msra.mxu0 0.0
  %7493 = vmatprep.subr.mxu0 0.0
  %7494 = vmatpush1.msra.mxu0 0.0
  %7495 = vmatprep.subr.mxu0 0.0
  %7496 = vmatpush1.msra.mxu0 0.0
  %7497 = vmatprep.subr.mxu0 0.0
  %7498 = vmatpush1.msra.mxu0 0.0
  %7499 = vmatprep.subr.mxu0 0.0
  %7500 = vmatpush1.msra.mxu0 0.0
  %7501 = vmatprep.subr.mxu0 0.0
  %7502 = vmatpush1.msra.mxu0 0.0
  %7503 = vmatprep.subr.mxu0 0.0
  %7504 = vmatpush1.msra.mxu0 0.0
  %7505 = vmatprep.subr.mxu0 0.0
  %7506 = vmatpush1.msra.mxu0 0.0
  %7507 = vmatprep.subr.mxu0 0.0
  %7508 = vmatpush1.msra.mxu0 0.0
  %7509 = vmatprep.subr.mxu0 0.0
  %7510 = vmatpush1.msra.mxu0 0.0
  %7511 = vmatprep.subr.mxu0 0.0
  %7512 = vmatpush1.msra.mxu0 0.0
  %7513 = vmatprep.subr.mxu0 0.0
  %7514 = vmatpush1.msra.mxu0 0.0
  %7515 = vmatprep.subr.mxu0 0.0
  %7516 = vmatpush1.msra.mxu0 0.0
  %7517 = vmatprep.subr.mxu0 0.0
  %7518 = vmatpush1.msra.mxu0 0.0
  %7519 = vmatprep.subr.mxu0 0.0
  %7520 = vmatpush1.msra.mxu0 0.0
  %7521 = vmatprep.subr.mxu0 0.0
  %7522 = vmatpush1.msra.mxu0 0.0
  %7523 = vmatprep.subr.mxu0 0.0
  %7524 = vmatpush1.msra.mxu0 0.0
  %7525 = vmatprep.subr.mxu0 0.0
  %7526 = vmatpush1.msra.mxu0 0.0
  %7527 = vmatprep.mubr.f32.mxu0 0.0
  %7528 = vmatmul.mubr.f32.gmra.mrb[0].mxu0 %v7269
  %v7529 = vpop.f32.mrb[0].mxu0
  %v7530 = vadd.f32 0.0, %v7529
  %v7531 = vpop.f32.mrb[0].mxu0
  %7532 = vmatprep.mubr.f32.mxu0 0.0
  %7533 = vmatmul.mubr.f32.gmra.mrb[0].mxu0 %v7272
  %v7534 = vpop.f32.mrb[0].mxu0
  %v7535 = vadd.f32 0.0, %v7534
  %v7536 = vpop.f32.mrb[0].mxu0
  %7537 = vmatprep.mubr.f32.mxu0 0.0
  %7538 = vmatmul.mubr.f32.gmra.mrb[0].mxu0 %v7275
  %v7539 = vpop.f32.mrb[0].mxu0
  %v7540 = vadd.f32 0.0, %v7539
  %v7541 = vpop.f32.mrb[0].mxu0
  %7542 = vmatprep.mubr.f32.mxu0 0.0
  %7543 = vmatmul.mubr.f32.gmra.mrb[0].mxu0 %v7278
  %v7544 = vpop.f32.mrb[0].mxu0
  %v7545 = vadd.f32 0.0, %v7544
  %v7546 = vpop.f32.mrb[0].mxu0
  %7547 = vmatprep.mubr.f32.mxu0 0.0
  %7548 = vmatmul.mubr.f32.gmra.mrb[0].mxu0 %v7281
  %v7549 = vpop.f32.mrb[0].mxu0
  %v7550 = vadd.f32 0.0, %v7549
  %v7551 = vpop.f32.mrb[0].mxu0
  %7552 = vmatprep.mubr.f32.mxu0 0.0
  %7553 = vmatmul.mubr.f32.gmra.mrb[0].mxu0 %v7284
  %v7554 = vpop.f32.mrb[0].mxu0
  %v7555 = vadd.f32 0.0, %v7554
  %v7556 = vpop.f32.mrb[0].mxu0
  %7557 = vmatprep.mubr.f32.mxu0 0.0
  %7558 = vmatmul.mubr.f32.gmra.mrb[0].mxu0 %v7287
  %v7559 = vpop.f32.mrb[0].mxu0
  %v7560 = vadd.f32 0.0, %v7559
  %v7561 = vpop.f32.mrb[0].mxu0
  %7562 = vmatprep.mubr.f32.mxu0 0.0
  %7563 = vmatmul.mubr.f32.gmra.mrb[0].mxu0 %v7290
  %v7564 = vpop.f32.mrb[0].mxu0
  %v7565 = vadd.f32 0.0, %v7564
  %v7566 = vpop.f32.mrb[0].mxu0
  %7567 = vmatprep.mubr.f32.mxu0 0.0
  %7568 = vmatmul.mubr.f32.gmra.mrb[0].mxu0 %v7293
  %v7569 = vpop.f32.mrb[0].mxu0
  %v7570 = vadd.f32 0.0, %v7569
  %v7571 = vpop.f32.mrb[0].mxu0
  %7572 = vmatprep.mubr.f32.mxu0 0.0
  %7573 = vmatmul.mubr.f32.gmra.mrb[0].mxu0 %v7296
  %v7574 = vpop.f32.mrb[0].mxu0
  %v7575 = vadd.f32 0.0, %v7574
  %v7576 = vpop.f32.mrb[0].mxu0
  %7577 = vmatprep.mubr.f32.mxu0 0.0
  %7578 = vmatmul.mubr.f32.gmra.mrb[0].mxu0 %v7299
  %v7579 = vpop.f32.mrb[0].mxu0
  %v7580 = vadd.f32 0.0, %v7579
  %v7581 = vpop.f32.mrb[0].mxu0
  %7582 = vmatprep.mubr.f32.mxu0 0.0
  %7583 = vmatmul.mubr.f32.gmra.mrb[0].mxu0 %v7302
  %v7584 = vpop.f32.mrb[0].mxu0
  %v7585 = vadd.f32 0.0, %v7584
  %v7586 = vpop.f32.mrb[0].mxu0
  %7587 = vmatprep.mubr.f32.mxu0 0.0
  %7588 = vmatmul.mubr.f32.gmra.mrb[0].mxu0 %v7305
  %v7589 = vpop.f32.mrb[0].mxu0
  %v7590 = vadd.f32 0.0, %v7589
  %v7591 = vpop.f32.mrb[0].mxu0
  %7592 = vmatprep.mubr.f32.mxu0 0.0
  %7593 = vmatmul.mubr.f32.gmra.mrb[0].mxu0 %v7308
  %v7594 = vpop.f32.mrb[0].mxu0
  %v7595 = vadd.f32 0.0, %v7594
  %v7596 = vpop.f32.mrb[0].mxu0
  %7597 = vmatprep.mubr.f32.mxu0 0.0
  %7598 = vmatmul.mubr.f32.gmra.mrb[0].mxu0 %v7311
  %v7599 = vpop.f32.mrb[0].mxu0
  %v7600 = vadd.f32 0.0, %v7599
  %v7601 = vpop.f32.mrb[0].mxu0
  %7602 = vmatprep.mubr.f32.mxu0 0.0
  %7603 = vmatmul.mubr.f32.gmra.mrb[0].mxu0 %v7314
  %v7604 = vpop.f32.mrb[0].mxu0
  %v7605 = vadd.f32 0.0, %v7604
  %v7606 = vpop.f32.mrb[0].mxu0
  %7607 = vmatprep.mubr.f32.mxu0 0.0
  %7608 = vmatmul.mubr.f32.gmra.mrb[0].mxu0 %v7317
  %v7609 = vpop.f32.mrb[0].mxu0
  %v7610 = vadd.f32 0.0, %v7609
  %v7611 = vpop.f32.mrb[0].mxu0
  %7612 = vmatprep.mubr.f32.mxu0 0.0
  %7613 = vmatmul.mubr.f32.gmra.mrb[0].mxu0 %v7320
  %v7614 = vpop.f32.mrb[0].mxu0
  %v7615 = vadd.f32 0.0, %v7614
  %v7616 = vpop.f32.mrb[0].mxu0
  %7617 = vmatprep.mubr.f32.mxu0 0.0
  %7618 = vmatmul.mubr.f32.gmra.mrb[0].mxu0 %v7323
  %v7619 = vpop.f32.mrb[0].mxu0
  %v7620 = vadd.f32 0.0, %v7619
  %v7621 = vpop.f32.mrb[0].mxu0
  %7622 = vmatprep.mubr.f32.mxu0 0.0
  %7623 = vmatmul.mubr.f32.gmra.mrb[0].mxu0 %v7326
  %v7624 = vpop.f32.mrb[0].mxu0
  %v7625 = vadd.f32 0.0, %v7624
  %v7626 = vpop.f32.mrb[0].mxu0
  %7627 = vmatprep.mubr.f32.mxu0 0.0
  %7628 = vmatmul.mubr.f32.gmra.mrb[0].mxu0 %v7329
  %v7629 = vpop.f32.mrb[0].mxu0
  %v7630 = vadd.f32 0.0, %v7629
  %v7631 = vpop.f32.mrb[0].mxu0
  %7632 = vmatprep.mubr.f32.mxu0 0.0
  %7633 = vmatmul.mubr.f32.gmra.mrb[0].mxu0 %v7332
  %v7634 = vpop.f32.mrb[0].mxu0
  %v7635 = vadd.f32 0.0, %v7634
  %v7636 = vpop.f32.mrb[0].mxu0
  %7637 = vmatprep.mubr.f32.mxu0 0.0
  %7638 = vmatmul.mubr.f32.gmra.mrb[0].mxu0 %v7335
  %v7639 = vpop.f32.mrb[0].mxu0
  %v7640 = vadd.f32 0.0, %v7639
  %v7641 = vpop.f32.mrb[0].mxu0
  %7642 = vmatprep.mubr.f32.mxu0 0.0
  %7643 = vmatmul.mubr.f32.gmra.mrb[0].mxu0 %v7338
  %v7644 = vpop.f32.mrb[0].mxu0
  %v7645 = vadd.f32 0.0, %v7644
  %v7646 = vpop.f32.mrb[0].mxu0
  %7647 = vmatprep.mubr.f32.mxu0 0.0
  %7648 = vmatmul.mubr.f32.gmra.mrb[0].mxu0 %v7341
  %v7649 = vpop.f32.mrb[0].mxu0
  %v7650 = vadd.f32 0.0, %v7649
  %v7651 = vpop.f32.mrb[0].mxu0
  %7652 = vmatprep.mubr.f32.mxu0 0.0
  %7653 = vmatmul.mubr.f32.gmra.mrb[0].mxu0 %v7344
  %v7654 = vpop.f32.mrb[0].mxu0
  %v7655 = vadd.f32 0.0, %v7654
  %v7656 = vpop.f32.mrb[0].mxu0
  %7657 = vmatprep.mubr.f32.mxu0 0.0
  %7658 = vmatmul.mubr.f32.gmra.mrb[0].mxu0 %v7347
  %v7659 = vpop.f32.mrb[0].mxu0
  %v7660 = vadd.f32 0.0, %v7659
  %v7661 = vpop.f32.mrb[0].mxu0
  %7662 = vmatprep.mubr.f32.mxu0 0.0
  %7663 = vmatmul.mubr.f32.gmra.mrb[0].mxu0 %v7350
  %v7664 = vpop.f32.mrb[0].mxu0
  %v7665 = vadd.f32 0.0, %v7664
  %v7666 = vpop.f32.mrb[0].mxu0
  %7667 = vmatprep.mubr.f32.mxu0 0.0
  %7668 = vmatmul.mubr.f32.gmra.mrb[0].mxu0 %v7353
  %v7669 = vpop.f32.mrb[0].mxu0
  %v7670 = vadd.f32 0.0, %v7669
  %v7671 = vpop.f32.mrb[0].mxu0
  %7672 = vmatprep.mubr.f32.mxu0 0.0
  %7673 = vmatmul.mubr.f32.gmra.mrb[0].mxu0 %v7356
  %v7674 = vpop.f32.mrb[0].mxu0
  %v7675 = vadd.f32 0.0, %v7674
  %v7676 = vpop.f32.mrb[0].mxu0
  %7677 = vmatprep.mubr.f32.mxu0 0.0
  %7678 = vmatmul.mubr.f32.gmra.mrb[0].mxu0 %v7359
  %v7679 = vpop.f32.mrb[0].mxu0
  %v7680 = vadd.f32 0.0, %v7679
  %v7681 = vpop.f32.mrb[0].mxu0
  %7682 = vmatprep.mubr.f32.mxu0 0.0
  %7683 = vmatmul.mubr.f32.gmra.mrb[0].mxu0 %v7362
  %v7684 = vpop.f32.mrb[0].mxu0
  %v7685 = vadd.f32 0.0, %v7684
  %v7686 = vpop.f32.mrb[0].mxu0
  %7687 = vmatprep.mubr.f32.mxu0 0.0
  %7688 = vmatmul.mubr.f32.gmra.mrb[0].mxu0 %v7365
  %v7689 = vpop.f32.mrb[0].mxu0
  %v7690 = vadd.f32 0.0, %v7689
  %v7691 = vpop.f32.mrb[0].mxu0
  %7692 = vmatprep.mubr.f32.mxu0 0.0
  %7693 = vmatmul.mubr.f32.gmra.mrb[0].mxu0 %v7368
  %v7694 = vpop.f32.mrb[0].mxu0
  %v7695 = vadd.f32 0.0, %v7694
  %v7696 = vpop.f32.mrb[0].mxu0
  %7697 = vmatprep.mubr.f32.mxu0 0.0
  %7698 = vmatmul.mubr.f32.gmra.mrb[0].mxu0 %v7371
  %v7699 = vpop.f32.mrb[0].mxu0
  %v7700 = vadd.f32 0.0, %v7699
  %v7701 = vpop.f32.mrb[0].mxu0
  %7702 = vmatprep.mubr.f32.mxu0 0.0
  %7703 = vmatmul.mubr.f32.gmra.mrb[0].mxu0 %v7374
  %v7704 = vpop.f32.mrb[0].mxu0
  %v7705 = vadd.f32 0.0, %v7704
  %v7706 = vpop.f32.mrb[0].mxu0
  %7707 = vmatprep.mubr.f32.mxu0 0.0
  %7708 = vmatmul.mubr.f32.gmra.mrb[0].mxu0 %v7377
  %v7709 = vpop.f32.mrb[0].mxu0
  %v7710 = vadd.f32 0.0, %v7709
  %v7711 = vpop.f32.mrb[0].mxu0
  %7712 = vmatprep.mubr.f32.mxu0 0.0
  %7713 = vmatmul.mubr.f32.gmra.mrb[0].mxu0 %v7380
  %v7714 = vpop.f32.mrb[0].mxu0
  %v7715 = vadd.f32 0.0, %v7714
  %v7716 = vpop.f32.mrb[0].mxu0
  %7717 = vmatprep.mubr.f32.mxu0 0.0
  %7718 = vmatmul.mubr.f32.gmra.mrb[0].mxu0 %v7383
  %v7719 = vpop.f32.mrb[0].mxu0
  %v7720 = vadd.f32 0.0, %v7719
  %v7721 = vpop.f32.mrb[0].mxu0
  %7722 = vmatprep.mubr.f32.mxu0 0.0
  %7723 = vmatmul.mubr.f32.gmra.mrb[0].mxu0 %v7386
  %v7724 = vpop.f32.mrb[0].mxu0
  %v7725 = vadd.f32 0.0, %v7724
  %v7726 = vpop.f32.mrb[0].mxu0
  %7727 = vmatprep.mubr.f32.mxu0 0.0
  %7728 = vmatmul.mubr.f32.gmra.mrb[0].mxu0 %v7389
  %v7729 = vpop.f32.mrb[0].mxu0
  %v7730 = vadd.f32 0.0, %v7729
  %v7731 = vpop.f32.mrb[0].mxu0
  %7732 = vmatprep.mubr.f32.mxu0 0.0
  %7733 = vmatmul.mubr.f32.gmra.mrb[0].mxu0 %v7392
  %v7734 = vpop.f32.mrb[0].mxu0
  %v7735 = vadd.f32 0.0, %v7734
  %v7736 = vpop.f32.mrb[0].mxu0
  %7737 = vmatprep.mubr.f32.mxu0 0.0
  %7738 = vmatmul.mubr.f32.gmra.mrb[0].mxu0 %v7395
  %v7739 = vpop.f32.mrb[0].mxu0
  %v7740 = vadd.f32 0.0, %v7739
  %v7741 = vpop.f32.mrb[0].mxu0
  %7742 = vmatprep.mubr.f32.mxu0 0.0
  %7743 = vmatmul.mubr.f32.gmra.mrb[0].mxu0 %v7398
  %v7744 = vpop.f32.mrb[0].mxu0
  %v7745 = vadd.f32 0.0, %v7744
  %v7746 = vpop.f32.mrb[0].mxu0
  %7747 = vmatprep.mubr.f32.mxu0 0.0
  %7748 = vmatmul.mubr.f32.gmra.mrb[0].mxu0 %v7401
  %v7749 = vpop.f32.mrb[0].mxu0
  %v7750 = vadd.f32 0.0, %v7749
  %v7751 = vpop.f32.mrb[0].mxu0
  %7752 = vmatprep.mubr.f32.mxu0 0.0
  %7753 = vmatmul.mubr.f32.gmra.mrb[0].mxu0 %v7404
  %v7754 = vpop.f32.mrb[0].mxu0
  %v7755 = vadd.f32 0.0, %v7754
  %v7756 = vpop.f32.mrb[0].mxu0
  %7757 = vmatprep.mubr.f32.mxu0 0.0
  %7758 = vmatmul.mubr.f32.gmra.mrb[0].mxu0 %v7407
  %v7759 = vpop.f32.mrb[0].mxu0
  %v7760 = vadd.f32 0.0, %v7759
  %v7761 = vpop.f32.mrb[0].mxu0
  %7762 = vmatprep.mubr.f32.mxu0 0.0
  %7763 = vmatmul.mubr.f32.gmra.mrb[0].mxu0 %v7410
  %v7764 = vpop.f32.mrb[0].mxu0
  %v7765 = vadd.f32 0.0, %v7764
  %v7766 = vpop.f32.mrb[0].mxu0
  %7767 = vmatprep.mubr.f32.mxu0 0.0
  %7768 = vmatmul.mubr.f32.gmra.mrb[0].mxu0 %v7413
  %v7769 = vpop.f32.mrb[0].mxu0
  %v7770 = vadd.f32 0.0, %v7769
  %v7771 = vpop.f32.mrb[0].mxu0
  %7772 = vmatprep.mubr.f32.mxu0 0.0
  %7773 = vmatmul.mubr.f32.gmra.mrb[0].mxu0 %v7416
  %v7774 = vpop.f32.mrb[0].mxu0
  %v7775 = vadd.f32 0.0, %v7774
  %v7776 = vpop.f32.mrb[0].mxu0
  %7777 = vmatprep.mubr.f32.mxu0 0.0
  %7778 = vmatmul.mubr.f32.gmra.mrb[0].mxu0 %v7419
  %v7779 = vpop.f32.mrb[0].mxu0
  %v7780 = vadd.f32 0.0, %v7779
  %v7781 = vpop.f32.mrb[0].mxu0
  %7782 = vmatprep.mubr.f32.mxu0 0.0
  %7783 = vmatmul.mubr.f32.gmra.mrb[0].mxu0 %v7422
  %v7784 = vpop.f32.mrb[0].mxu0
  %v7785 = vadd.f32 0.0, %v7784
  %v7786 = vpop.f32.mrb[0].mxu0
  %7787 = vmatprep.mubr.f32.mxu0 0.0
  %7788 = vmatmul.mubr.f32.gmra.mrb[0].mxu0 %v7425
  %v7789 = vpop.f32.mrb[0].mxu0
  %v7790 = vadd.f32 0.0, %v7789
  %v7791 = vpop.f32.mrb[0].mxu0
  %7792 = vmatprep.mubr.f32.mxu0 0.0
  %7793 = vmatmul.mubr.f32.gmra.mrb[0].mxu0 %v7428
  %v7794 = vpop.f32.mrb[0].mxu0
  %v7795 = vadd.f32 0.0, %v7794
  %v7796 = vpop.f32.mrb[0].mxu0
  %7797 = vmatprep.mubr.f32.mxu0 0.0
  %7798 = vmatmul.mubr.f32.gmra.mrb[0].mxu0 %v7431
  %v7799 = vpop.f32.mrb[0].mxu0
  %v7800 = vadd.f32 0.0, %v7799
  %v7801 = vpop.f32.mrb[0].mxu0
  %7802 = vmatprep.mubr.f32.mxu0 0.0
  %7803 = vmatmul.mubr.f32.gmra.mrb[0].mxu0 %v7434
  %v7804 = vpop.f32.mrb[0].mxu0
  %v7805 = vadd.f32 0.0, %v7804
  %v7806 = vpop.f32.mrb[0].mxu0
  %7807 = vmatprep.mubr.f32.mxu0 0.0
  %7808 = vmatmul.mubr.f32.gmra.mrb[0].mxu0 %v7437
  %v7809 = vpop.f32.mrb[0].mxu0
  %v7810 = vadd.f32 0.0, %v7809
  %v7811 = vpop.f32.mrb[0].mxu0
  %7812 = vmatprep.mubr.f32.mxu0 0.0
  %7813 = vmatmul.mubr.f32.gmra.mrb[0].mxu0 %v7440
  %v7814 = vpop.f32.mrb[0].mxu0
  %v7815 = vadd.f32 0.0, %v7814
  %v7816 = vpop.f32.mrb[0].mxu0
  %7817 = vmatprep.mubr.f32.mxu0 0.0
  %7818 = vmatmul.mubr.f32.gmra.mrb[0].mxu0 %v7443
  %v7819 = vpop.f32.mrb[0].mxu0
  %v7820 = vadd.f32 0.0, %v7819
  %v7821 = vpop.f32.mrb[0].mxu0
  %7822 = vmatprep.mubr.f32.mxu0 0.0
  %7823 = vmatmul.mubr.f32.gmra.mrb[0].mxu0 %v7446
  %v7824 = vpop.f32.mrb[0].mxu0
  %v7825 = vadd.f32 0.0, %v7824
  %v7826 = vpop.f32.mrb[0].mxu0
  %7827 = vmatprep.mubr.f32.mxu0 0.0
  %7828 = vmatmul.mubr.f32.gmra.mrb[0].mxu0 %v7449
  %v7829 = vpop.f32.mrb[0].mxu0
  %v7830 = vadd.f32 0.0, %v7829
  %v7831 = vpop.f32.mrb[0].mxu0
  %7832 = vmatprep.mubr.f32.mxu0 0.0
  %7833 = vmatmul.mubr.f32.gmra.mrb[0].mxu0 %v7452
  %v7834 = vpop.f32.mrb[0].mxu0
  %v7835 = vadd.f32 0.0, %v7834
  %v7836 = vpop.f32.mrb[0].mxu0
  %7837 = vmatprep.mubr.f32.mxu0 0.0
  %7838 = vmatmul.mubr.f32.gmra.mrb[0].mxu0 %v7455
  %v7839 = vpop.f32.mrb[0].mxu0
  %v7840 = vadd.f32 0.0, %v7839
  %v7841 = vpop.f32.mrb[0].mxu0
  %7842 = vmatprep.mubr.f32.mxu0 0.0
  %7843 = vmatmul.mubr.f32.gmra.mrb[0].mxu0 %v7458
  %v7844 = vpop.f32.mrb[0].mxu0
  %v7845 = vadd.f32 0.0, %v7844
  %v7846 = vpop.f32.mrb[0].mxu0
  %7847 = vdwg.mxu0
  %v7849 = vsel %vm26, %v7137, 0
  %v7852 = vsel %vm26, %v7138, 0
  %v7855 = vsel %vm26, %v7139, 0
  %v7858 = vsel %vm26, %v7140, 0
  %v7861 = vsel %vm26, %v7141, 0
  %v7864 = vsel %vm26, %v7142, 0
  %v7867 = vsel %vm26, %v7143, 0
  %v7870 = vsel %vm26, %v7144, 0
  %v7873 = vsel %vm26, %v7145, 0
  %v7876 = vsel %vm26, %v7146, 0
  %v7879 = vsel %vm26, %v7147, 0
  %v7882 = vsel %vm26, %v7148, 0
  %v7885 = vsel %vm26, %v7149, 0
  %v7888 = vsel %vm26, %v7150, 0
  %v7891 = vsel %vm26, %v7151, 0
  %v7894 = vsel %vm26, %v7152, 0
  %v7897 = vsel %vm26, %v7153, 0
  %v7900 = vsel %vm26, %v7154, 0
  %v7903 = vsel %vm26, %v7155, 0
  %v7906 = vsel %vm26, %v7156, 0
  %v7909 = vsel %vm26, %v7157, 0
  %v7912 = vsel %vm26, %v7158, 0
  %v7915 = vsel %vm26, %v7159, 0
  %v7918 = vsel %vm26, %v7160, 0
  %v7921 = vsel %vm26, %v7161, 0
  %v7924 = vsel %vm26, %v7162, 0
  %v7927 = vsel %vm26, %v7163, 0
  %v7930 = vsel %vm26, %v7164, 0
  %v7933 = vsel %vm26, %v7165, 0
  %v7936 = vsel %vm26, %v7166, 0
  %v7939 = vsel %vm26, %v7167, 0
  %v7942 = vsel %vm26, %v7168, 0
  %v7945 = vsel %vm26, %v7169, 0
  %v7948 = vsel %vm26, %v7170, 0
  %v7951 = vsel %vm26, %v7171, 0
  %v7954 = vsel %vm26, %v7172, 0
  %v7957 = vsel %vm26, %v7173, 0
  %v7960 = vsel %vm26, %v7174, 0
  %v7963 = vsel %vm26, %v7175, 0
  %v7966 = vsel %vm26, %v7176, 0
  %v7969 = vsel %vm26, %v7177, 0
  %v7972 = vsel %vm26, %v7178, 0
  %v7975 = vsel %vm26, %v7179, 0
  %v7978 = vsel %vm26, %v7180, 0
  %v7981 = vsel %vm26, %v7181, 0
  %v7984 = vsel %vm26, %v7182, 0
  %v7987 = vsel %vm26, %v7183, 0
  %v7990 = vsel %vm26, %v7184, 0
  %v7993 = vsel %vm26, %v7185, 0
  %v7996 = vsel %vm26, %v7186, 0
  %v7999 = vsel %vm26, %v7187, 0
  %v8002 = vsel %vm26, %v7188, 0
  %v8005 = vsel %vm26, %v7189, 0
  %v8008 = vsel %vm26, %v7190, 0
  %v8011 = vsel %vm26, %v7191, 0
  %v8014 = vsel %vm26, %v7192, 0
  %v8017 = vsel %vm26, %v7193, 0
  %v8020 = vsel %vm26, %v7194, 0
  %v8023 = vsel %vm26, %v7195, 0
  %v8026 = vsel %vm26, %v7196, 0
  %v8029 = vsel %vm26, %v7197, 0
  %v8032 = vsel %vm26, %v7198, 0
  %v8035 = vsel %vm26, %v7199, 0
  %v8038 = vsel %vm26, %v7200, 0
  %v8041 = vsel %vm588, %v7201, 0
  %8043 = vmatprep.subr.mxu0 0.0
  %8044 = vmatpush1.msra.mxu0 %v8041
  %8045 = vmatprep.subr.mxu0 0.0
  %8046 = vmatpush1.msra.mxu0 0.0
  %8047 = vmatprep.subr.mxu0 0.0
  %8048 = vmatpush1.msra.mxu0 0.0
  %8049 = vmatprep.subr.mxu0 0.0
  %8050 = vmatpush1.msra.mxu0 0.0
  %8051 = vmatprep.subr.mxu0 0.0
  %8052 = vmatpush1.msra.mxu0 0.0
  %8053 = vmatprep.subr.mxu0 0.0
  %8054 = vmatpush1.msra.mxu0 0.0
  %8055 = vmatprep.subr.mxu0 0.0
  %8056 = vmatpush1.msra.mxu0 0.0
  %8057 = vmatprep.subr.mxu0 0.0
  %8058 = vmatpush1.msra.mxu0 0.0
  %8059 = vmatprep.subr.mxu0 0.0
  %8060 = vmatpush1.msra.mxu0 0.0
  %8061 = vmatprep.subr.mxu0 0.0
  %8062 = vmatpush1.msra.mxu0 0.0
  %8063 = vmatprep.subr.mxu0 0.0
  %8064 = vmatpush1.msra.mxu0 0.0
  %8065 = vmatprep.subr.mxu0 0.0
  %8066 = vmatpush1.msra.mxu0 0.0
  %8067 = vmatprep.subr.mxu0 0.0
  %8068 = vmatpush1.msra.mxu0 0.0
  %8069 = vmatprep.subr.mxu0 0.0
  %8070 = vmatpush1.msra.mxu0 0.0
  %8071 = vmatprep.subr.mxu0 0.0
  %8072 = vmatpush1.msra.mxu0 0.0
  %8073 = vmatprep.subr.mxu0 0.0
  %8074 = vmatpush1.msra.mxu0 0.0
  %8075 = vmatprep.subr.mxu0 0.0
  %8076 = vmatpush1.msra.mxu0 0.0
  %8077 = vmatprep.subr.mxu0 0.0
  %8078 = vmatpush1.msra.mxu0 0.0
  %8079 = vmatprep.subr.mxu0 0.0
  %8080 = vmatpush1.msra.mxu0 0.0
  %8081 = vmatprep.subr.mxu0 0.0
  %8082 = vmatpush1.msra.mxu0 0.0
  %8083 = vmatprep.subr.mxu0 0.0
  %8084 = vmatpush1.msra.mxu0 0.0
  %8085 = vmatprep.subr.mxu0 0.0
  %8086 = vmatpush1.msra.mxu0 0.0
  %8087 = vmatprep.subr.mxu0 0.0
  %8088 = vmatpush1.msra.mxu0 0.0
  %8089 = vmatprep.subr.mxu0 0.0
  %8090 = vmatpush1.msra.mxu0 0.0
  %8091 = vmatprep.subr.mxu0 0.0
  %8092 = vmatpush1.msra.mxu0 0.0
  %8093 = vmatprep.subr.mxu0 0.0
  %8094 = vmatpush1.msra.mxu0 0.0
  %8095 = vmatprep.subr.mxu0 0.0
  %8096 = vmatpush1.msra.mxu0 0.0
  %8097 = vmatprep.subr.mxu0 0.0
  %8098 = vmatpush1.msra.mxu0 0.0
  %8099 = vmatprep.subr.mxu0 0.0
  %8100 = vmatpush1.msra.mxu0 0.0
  %8101 = vmatprep.subr.mxu0 0.0
  %8102 = vmatpush1.msra.mxu0 0.0
  %8103 = vmatprep.subr.mxu0 0.0
  %8104 = vmatpush1.msra.mxu0 0.0
  %8105 = vmatprep.subr.mxu0 0.0
  %8106 = vmatpush1.msra.mxu0 0.0
  %8107 = vmatprep.mubr.f32.mxu0 0.0
  %8108 = vmatmul.mubr.f32.gmra.mrb[0].mxu0 %v7849
  %v8109 = vpop.f32.mrb[0].mxu0
  %v8110 = vadd.f32 %v7530, %v8109
  %v8111 = vpop.f32.mrb[0].mxu0
  %8112 = vmatprep.mubr.f32.mxu0 0.0
  %8113 = vmatmul.mubr.f32.gmra.mrb[0].mxu0 %v7852
  %v8114 = vpop.f32.mrb[0].mxu0
  %v8115 = vadd.f32 %v7535, %v8114
  %v8116 = vpop.f32.mrb[0].mxu0
  %8117 = vmatprep.mubr.f32.mxu0 0.0
  %8118 = vmatmul.mubr.f32.gmra.mrb[0].mxu0 %v7855
  %v8119 = vpop.f32.mrb[0].mxu0
  %v8120 = vadd.f32 %v7540, %v8119
  %v8121 = vpop.f32.mrb[0].mxu0
  %8122 = vmatprep.mubr.f32.mxu0 0.0
  %8123 = vmatmul.mubr.f32.gmra.mrb[0].mxu0 %v7858
  %v8124 = vpop.f32.mrb[0].mxu0
  %v8125 = vadd.f32 %v7545, %v8124
  %v8126 = vpop.f32.mrb[0].mxu0
  %8127 = vmatprep.mubr.f32.mxu0 0.0
  %8128 = vmatmul.mubr.f32.gmra.mrb[0].mxu0 %v7861
  %v8129 = vpop.f32.mrb[0].mxu0
  %v8130 = vadd.f32 %v7550, %v8129
  %v8131 = vpop.f32.mrb[0].mxu0
  %8132 = vmatprep.mubr.f32.mxu0 0.0
  %8133 = vmatmul.mubr.f32.gmra.mrb[0].mxu0 %v7864
  %v8134 = vpop.f32.mrb[0].mxu0
  %v8135 = vadd.f32 %v7555, %v8134
  %v8136 = vpop.f32.mrb[0].mxu0
  %8137 = vmatprep.mubr.f32.mxu0 0.0
  %8138 = vmatmul.mubr.f32.gmra.mrb[0].mxu0 %v7867
  %v8139 = vpop.f32.mrb[0].mxu0
  %v8140 = vadd.f32 %v7560, %v8139
  %v8141 = vpop.f32.mrb[0].mxu0
  %8142 = vmatprep.mubr.f32.mxu0 0.0
  %8143 = vmatmul.mubr.f32.gmra.mrb[0].mxu0 %v7870
  %v8144 = vpop.f32.mrb[0].mxu0
  %v8145 = vadd.f32 %v7565, %v8144
  %v8146 = vpop.f32.mrb[0].mxu0
  %8147 = vmatprep.mubr.f32.mxu0 0.0
  %8148 = vmatmul.mubr.f32.gmra.mrb[0].mxu0 %v7873
  %v8149 = vpop.f32.mrb[0].mxu0
  %v8150 = vadd.f32 %v7570, %v8149
  %v8151 = vpop.f32.mrb[0].mxu0
  %8152 = vmatprep.mubr.f32.mxu0 0.0
  %8153 = vmatmul.mubr.f32.gmra.mrb[0].mxu0 %v7876
  %v8154 = vpop.f32.mrb[0].mxu0
  %v8155 = vadd.f32 %v7575, %v8154
  %v8156 = vpop.f32.mrb[0].mxu0
  %8157 = vmatprep.mubr.f32.mxu0 0.0
  %8158 = vmatmul.mubr.f32.gmra.mrb[0].mxu0 %v7879
  %v8159 = vpop.f32.mrb[0].mxu0
  %v8160 = vadd.f32 %v7580, %v8159
  %v8161 = vpop.f32.mrb[0].mxu0
  %8162 = vmatprep.mubr.f32.mxu0 0.0
  %8163 = vmatmul.mubr.f32.gmra.mrb[0].mxu0 %v7882
  %v8164 = vpop.f32.mrb[0].mxu0
  %v8165 = vadd.f32 %v7585, %v8164
  %v8166 = vpop.f32.mrb[0].mxu0
  %8167 = vmatprep.mubr.f32.mxu0 0.0
  %8168 = vmatmul.mubr.f32.gmra.mrb[0].mxu0 %v7885
  %v8169 = vpop.f32.mrb[0].mxu0
  %v8170 = vadd.f32 %v7590, %v8169
  %v8171 = vpop.f32.mrb[0].mxu0
  %8172 = vmatprep.mubr.f32.mxu0 0.0
  %8173 = vmatmul.mubr.f32.gmra.mrb[0].mxu0 %v7888
  %v8174 = vpop.f32.mrb[0].mxu0
  %v8175 = vadd.f32 %v7595, %v8174
  %v8176 = vpop.f32.mrb[0].mxu0
  %8177 = vmatprep.mubr.f32.mxu0 0.0
  %8178 = vmatmul.mubr.f32.gmra.mrb[0].mxu0 %v7891
  %v8179 = vpop.f32.mrb[0].mxu0
  %v8180 = vadd.f32 %v7600, %v8179
  %v8181 = vpop.f32.mrb[0].mxu0
  %8182 = vmatprep.mubr.f32.mxu0 0.0
  %8183 = vmatmul.mubr.f32.gmra.mrb[0].mxu0 %v7894
  %v8184 = vpop.f32.mrb[0].mxu0
  %v8185 = vadd.f32 %v7605, %v8184
  %v8186 = vpop.f32.mrb[0].mxu0
  %8187 = vmatprep.mubr.f32.mxu0 0.0
  %8188 = vmatmul.mubr.f32.gmra.mrb[0].mxu0 %v7897
  %v8189 = vpop.f32.mrb[0].mxu0
  %v8190 = vadd.f32 %v7610, %v8189
  %v8191 = vpop.f32.mrb[0].mxu0
  %8192 = vmatprep.mubr.f32.mxu0 0.0
  %8193 = vmatmul.mubr.f32.gmra.mrb[0].mxu0 %v7900
  %v8194 = vpop.f32.mrb[0].mxu0
  %v8195 = vadd.f32 %v7615, %v8194
  %v8196 = vpop.f32.mrb[0].mxu0
  %8197 = vmatprep.mubr.f32.mxu0 0.0
  %8198 = vmatmul.mubr.f32.gmra.mrb[0].mxu0 %v7903
  %v8199 = vpop.f32.mrb[0].mxu0
  %v8200 = vadd.f32 %v7620, %v8199
  %v8201 = vpop.f32.mrb[0].mxu0
  %8202 = vmatprep.mubr.f32.mxu0 0.0
  %8203 = vmatmul.mubr.f32.gmra.mrb[0].mxu0 %v7906
  %v8204 = vpop.f32.mrb[0].mxu0
  %v8205 = vadd.f32 %v7625, %v8204
  %v8206 = vpop.f32.mrb[0].mxu0
  %8207 = vmatprep.mubr.f32.mxu0 0.0
  %8208 = vmatmul.mubr.f32.gmra.mrb[0].mxu0 %v7909
  %v8209 = vpop.f32.mrb[0].mxu0
  %v8210 = vadd.f32 %v7630, %v8209
  %v8211 = vpop.f32.mrb[0].mxu0
  %8212 = vmatprep.mubr.f32.mxu0 0.0
  %8213 = vmatmul.mubr.f32.gmra.mrb[0].mxu0 %v7912
  %v8214 = vpop.f32.mrb[0].mxu0
  %v8215 = vadd.f32 %v7635, %v8214
  %v8216 = vpop.f32.mrb[0].mxu0
  %8217 = vmatprep.mubr.f32.mxu0 0.0
  %8218 = vmatmul.mubr.f32.gmra.mrb[0].mxu0 %v7915
  %v8219 = vpop.f32.mrb[0].mxu0
  %v8220 = vadd.f32 %v7640, %v8219
  %v8221 = vpop.f32.mrb[0].mxu0
  %8222 = vmatprep.mubr.f32.mxu0 0.0
  %8223 = vmatmul.mubr.f32.gmra.mrb[0].mxu0 %v7918
  %v8224 = vpop.f32.mrb[0].mxu0
  %v8225 = vadd.f32 %v7645, %v8224
  %v8226 = vpop.f32.mrb[0].mxu0
  %8227 = vmatprep.mubr.f32.mxu0 0.0
  %8228 = vmatmul.mubr.f32.gmra.mrb[0].mxu0 %v7921
  %v8229 = vpop.f32.mrb[0].mxu0
  %v8230 = vadd.f32 %v7650, %v8229
  %v8231 = vpop.f32.mrb[0].mxu0
  %8232 = vmatprep.mubr.f32.mxu0 0.0
  %8233 = vmatmul.mubr.f32.gmra.mrb[0].mxu0 %v7924
  %v8234 = vpop.f32.mrb[0].mxu0
  %v8235 = vadd.f32 %v7655, %v8234
  %v8236 = vpop.f32.mrb[0].mxu0
  %8237 = vmatprep.mubr.f32.mxu0 0.0
  %8238 = vmatmul.mubr.f32.gmra.mrb[0].mxu0 %v7927
  %v8239 = vpop.f32.mrb[0].mxu0
  %v8240 = vadd.f32 %v7660, %v8239
  %v8241 = vpop.f32.mrb[0].mxu0
  %8242 = vmatprep.mubr.f32.mxu0 0.0
  %8243 = vmatmul.mubr.f32.gmra.mrb[0].mxu0 %v7930
  %v8244 = vpop.f32.mrb[0].mxu0
  %v8245 = vadd.f32 %v7665, %v8244
  %v8246 = vpop.f32.mrb[0].mxu0
  %8247 = vmatprep.mubr.f32.mxu0 0.0
  %8248 = vmatmul.mubr.f32.gmra.mrb[0].mxu0 %v7933
  %v8249 = vpop.f32.mrb[0].mxu0
  %v8250 = vadd.f32 %v7670, %v8249
  %v8251 = vpop.f32.mrb[0].mxu0
  %8252 = vmatprep.mubr.f32.mxu0 0.0
  %8253 = vmatmul.mubr.f32.gmra.mrb[0].mxu0 %v7936
  %v8254 = vpop.f32.mrb[0].mxu0
  %v8255 = vadd.f32 %v7675, %v8254
  %v8256 = vpop.f32.mrb[0].mxu0
  %8257 = vmatprep.mubr.f32.mxu0 0.0
  %8258 = vmatmul.mubr.f32.gmra.mrb[0].mxu0 %v7939
  %v8259 = vpop.f32.mrb[0].mxu0
  %v8260 = vadd.f32 %v7680, %v8259
  %v8261 = vpop.f32.mrb[0].mxu0
  %8262 = vmatprep.mubr.f32.mxu0 0.0
  %8263 = vmatmul.mubr.f32.gmra.mrb[0].mxu0 %v7942
  %v8264 = vpop.f32.mrb[0].mxu0
  %v8265 = vadd.f32 %v7685, %v8264
  %v8266 = vpop.f32.mrb[0].mxu0
  %8267 = vmatprep.mubr.f32.mxu0 0.0
  %8268 = vmatmul.mubr.f32.gmra.mrb[0].mxu0 %v7945
  %v8269 = vpop.f32.mrb[0].mxu0
  %v8270 = vadd.f32 %v7690, %v8269
  %v8271 = vpop.f32.mrb[0].mxu0
  %8272 = vmatprep.mubr.f32.mxu0 0.0
  %8273 = vmatmul.mubr.f32.gmra.mrb[0].mxu0 %v7948
  %v8274 = vpop.f32.mrb[0].mxu0
  %v8275 = vadd.f32 %v7695, %v8274
  %v8276 = vpop.f32.mrb[0].mxu0
  %8277 = vmatprep.mubr.f32.mxu0 0.0
  %8278 = vmatmul.mubr.f32.gmra.mrb[0].mxu0 %v7951
  %v8279 = vpop.f32.mrb[0].mxu0
  %v8280 = vadd.f32 %v7700, %v8279
  %v8281 = vpop.f32.mrb[0].mxu0
  %8282 = vmatprep.mubr.f32.mxu0 0.0
  %8283 = vmatmul.mubr.f32.gmra.mrb[0].mxu0 %v7954
  %v8284 = vpop.f32.mrb[0].mxu0
  %v8285 = vadd.f32 %v7705, %v8284
  %v8286 = vpop.f32.mrb[0].mxu0
  %8287 = vmatprep.mubr.f32.mxu0 0.0
  %8288 = vmatmul.mubr.f32.gmra.mrb[0].mxu0 %v7957
  %v8289 = vpop.f32.mrb[0].mxu0
  %v8290 = vadd.f32 %v7710, %v8289
  %v8291 = vpop.f32.mrb[0].mxu0
  %8292 = vmatprep.mubr.f32.mxu0 0.0
  %8293 = vmatmul.mubr.f32.gmra.mrb[0].mxu0 %v7960
  %v8294 = vpop.f32.mrb[0].mxu0
  %v8295 = vadd.f32 %v7715, %v8294
  %v8296 = vpop.f32.mrb[0].mxu0
  %8297 = vmatprep.mubr.f32.mxu0 0.0
  %8298 = vmatmul.mubr.f32.gmra.mrb[0].mxu0 %v7963
  %v8299 = vpop.f32.mrb[0].mxu0
  %v8300 = vadd.f32 %v7720, %v8299
  %v8301 = vpop.f32.mrb[0].mxu0
  %8302 = vmatprep.mubr.f32.mxu0 0.0
  %8303 = vmatmul.mubr.f32.gmra.mrb[0].mxu0 %v7966
  %v8304 = vpop.f32.mrb[0].mxu0
  %v8305 = vadd.f32 %v7725, %v8304
  %v8306 = vpop.f32.mrb[0].mxu0
  %8307 = vmatprep.mubr.f32.mxu0 0.0
  %8308 = vmatmul.mubr.f32.gmra.mrb[0].mxu0 %v7969
  %v8309 = vpop.f32.mrb[0].mxu0
  %v8310 = vadd.f32 %v7730, %v8309
  %v8311 = vpop.f32.mrb[0].mxu0
  %8312 = vmatprep.mubr.f32.mxu0 0.0
  %8313 = vmatmul.mubr.f32.gmra.mrb[0].mxu0 %v7972
  %v8314 = vpop.f32.mrb[0].mxu0
  %v8315 = vadd.f32 %v7735, %v8314
  %v8316 = vpop.f32.mrb[0].mxu0
  %8317 = vmatprep.mubr.f32.mxu0 0.0
  %8318 = vmatmul.mubr.f32.gmra.mrb[0].mxu0 %v7975
  %v8319 = vpop.f32.mrb[0].mxu0
  %v8320 = vadd.f32 %v7740, %v8319
  %v8321 = vpop.f32.mrb[0].mxu0
  %8322 = vmatprep.mubr.f32.mxu0 0.0
  %8323 = vmatmul.mubr.f32.gmra.mrb[0].mxu0 %v7978
  %v8324 = vpop.f32.mrb[0].mxu0
  %v8325 = vadd.f32 %v7745, %v8324
  %v8326 = vpop.f32.mrb[0].mxu0
  %8327 = vmatprep.mubr.f32.mxu0 0.0
  %8328 = vmatmul.mubr.f32.gmra.mrb[0].mxu0 %v7981
  %v8329 = vpop.f32.mrb[0].mxu0
  %v8330 = vadd.f32 %v7750, %v8329
  %v8331 = vpop.f32.mrb[0].mxu0
  %8332 = vmatprep.mubr.f32.mxu0 0.0
  %8333 = vmatmul.mubr.f32.gmra.mrb[0].mxu0 %v7984
  %v8334 = vpop.f32.mrb[0].mxu0
  %v8335 = vadd.f32 %v7755, %v8334
  %v8336 = vpop.f32.mrb[0].mxu0
  %8337 = vmatprep.mubr.f32.mxu0 0.0
  %8338 = vmatmul.mubr.f32.gmra.mrb[0].mxu0 %v7987
  %v8339 = vpop.f32.mrb[0].mxu0
  %v8340 = vadd.f32 %v7760, %v8339
  %v8341 = vpop.f32.mrb[0].mxu0
  %8342 = vmatprep.mubr.f32.mxu0 0.0
  %8343 = vmatmul.mubr.f32.gmra.mrb[0].mxu0 %v7990
  %v8344 = vpop.f32.mrb[0].mxu0
  %v8345 = vadd.f32 %v7765, %v8344
  %v8346 = vpop.f32.mrb[0].mxu0
  %8347 = vmatprep.mubr.f32.mxu0 0.0
  %8348 = vmatmul.mubr.f32.gmra.mrb[0].mxu0 %v7993
  %v8349 = vpop.f32.mrb[0].mxu0
  %v8350 = vadd.f32 %v7770, %v8349
  %v8351 = vpop.f32.mrb[0].mxu0
  %8352 = vmatprep.mubr.f32.mxu0 0.0
  %8353 = vmatmul.mubr.f32.gmra.mrb[0].mxu0 %v7996
  %v8354 = vpop.f32.mrb[0].mxu0
  %v8355 = vadd.f32 %v7775, %v8354
  %v8356 = vpop.f32.mrb[0].mxu0
  %8357 = vmatprep.mubr.f32.mxu0 0.0
  %8358 = vmatmul.mubr.f32.gmra.mrb[0].mxu0 %v7999
  %v8359 = vpop.f32.mrb[0].mxu0
  %v8360 = vadd.f32 %v7780, %v8359
  %v8361 = vpop.f32.mrb[0].mxu0
  %8362 = vmatprep.mubr.f32.mxu0 0.0
  %8363 = vmatmul.mubr.f32.gmra.mrb[0].mxu0 %v8002
  %v8364 = vpop.f32.mrb[0].mxu0
  %v8365 = vadd.f32 %v7785, %v8364
  %v8366 = vpop.f32.mrb[0].mxu0
  %8367 = vmatprep.mubr.f32.mxu0 0.0
  %8368 = vmatmul.mubr.f32.gmra.mrb[0].mxu0 %v8005
  %v8369 = vpop.f32.mrb[0].mxu0
  %v8370 = vadd.f32 %v7790, %v8369
  %v8371 = vpop.f32.mrb[0].mxu0
  %8372 = vmatprep.mubr.f32.mxu0 0.0
  %8373 = vmatmul.mubr.f32.gmra.mrb[0].mxu0 %v8008
  %v8374 = vpop.f32.mrb[0].mxu0
  %v8375 = vadd.f32 %v7795, %v8374
  %v8376 = vpop.f32.mrb[0].mxu0
  %8377 = vmatprep.mubr.f32.mxu0 0.0
  %8378 = vmatmul.mubr.f32.gmra.mrb[0].mxu0 %v8011
  %v8379 = vpop.f32.mrb[0].mxu0
  %v8380 = vadd.f32 %v7800, %v8379
  %v8381 = vpop.f32.mrb[0].mxu0
  %8382 = vmatprep.mubr.f32.mxu0 0.0
  %8383 = vmatmul.mubr.f32.gmra.mrb[0].mxu0 %v8014
  %v8384 = vpop.f32.mrb[0].mxu0
  %v8385 = vadd.f32 %v7805, %v8384
  %v8386 = vpop.f32.mrb[0].mxu0
  %8387 = vmatprep.mubr.f32.mxu0 0.0
  %8388 = vmatmul.mubr.f32.gmra.mrb[0].mxu0 %v8017
  %v8389 = vpop.f32.mrb[0].mxu0
  %v8390 = vadd.f32 %v7810, %v8389
  %v8391 = vpop.f32.mrb[0].mxu0
  %8392 = vmatprep.mubr.f32.mxu0 0.0
  %8393 = vmatmul.mubr.f32.gmra.mrb[0].mxu0 %v8020
  %v8394 = vpop.f32.mrb[0].mxu0
  %v8395 = vadd.f32 %v7815, %v8394
  %v8396 = vpop.f32.mrb[0].mxu0
  %8397 = vmatprep.mubr.f32.mxu0 0.0
  %8398 = vmatmul.mubr.f32.gmra.mrb[0].mxu0 %v8023
  %v8399 = vpop.f32.mrb[0].mxu0
  %v8400 = vadd.f32 %v7820, %v8399
  %v8401 = vpop.f32.mrb[0].mxu0
  %8402 = vmatprep.mubr.f32.mxu0 0.0
  %8403 = vmatmul.mubr.f32.gmra.mrb[0].mxu0 %v8026
  %v8404 = vpop.f32.mrb[0].mxu0
  %v8405 = vadd.f32 %v7825, %v8404
  %v8406 = vpop.f32.mrb[0].mxu0
  %8407 = vmatprep.mubr.f32.mxu0 0.0
  %8408 = vmatmul.mubr.f32.gmra.mrb[0].mxu0 %v8029
  %v8409 = vpop.f32.mrb[0].mxu0
  %v8410 = vadd.f32 %v7830, %v8409
  %v8411 = vpop.f32.mrb[0].mxu0
  %8412 = vmatprep.mubr.f32.mxu0 0.0
  %8413 = vmatmul.mubr.f32.gmra.mrb[0].mxu0 %v8032
  %v8414 = vpop.f32.mrb[0].mxu0
  %v8415 = vadd.f32 %v7835, %v8414
  %v8416 = vpop.f32.mrb[0].mxu0
  %8417 = vmatprep.mubr.f32.mxu0 0.0
  %8418 = vmatmul.mubr.f32.gmra.mrb[0].mxu0 %v8035
  %v8419 = vpop.f32.mrb[0].mxu0
  %v8420 = vadd.f32 %v7840, %v8419
  %v8421 = vpop.f32.mrb[0].mxu0
  %8422 = vmatprep.mubr.f32.mxu0 0.0
  %8423 = vmatmul.mubr.f32.gmra.mrb[0].mxu0 %v8038
  %v8424 = vpop.f32.mrb[0].mxu0
  %v8425 = vadd.f32 %v7845, %v8424
  %v8426 = vpop.f32.mrb[0].mxu0
  %8427 = vdwg.mxu0
  %v8428 = vld [vmem:[#allocation2 + $0x2] sm:$0xff]
  %v8429 = vld [vmem:[#allocation2 + $0xa] sm:$0xff]
  %v8430 = vld [vmem:[#allocation2 + $0x1a] sm:$0xff]
  %v8431 = vld [vmem:[#allocation2 + $0x22] sm:$0xff]
  %v8432 = vld [vmem:[#allocation2 + $0x32] sm:$0xff]
  %v8433 = vld [vmem:[#allocation2 + $0x3a] sm:$0xff]
  %v8434 = vld [vmem:[#allocation2 + $0x4a] sm:$0xff]
  %v8435 = vld [vmem:[#allocation2 + $0x52] sm:$0xff]
  %v8436 = vld [vmem:[#allocation2 + $0x62] sm:$0xff]
  %v8437 = vld [vmem:[#allocation2 + $0x6a] sm:$0xff]
  %v8438 = vld [vmem:[#allocation2 + $0x7a] sm:$0xff]
  %v8439 = vld [vmem:[#allocation2 + $0x82] sm:$0xff]
  %v8440 = vld [vmem:[#allocation2 + $0x92] sm:$0xff]
  %v8441 = vld [vmem:[#allocation2 + $0x9a] sm:$0xff]
  %v8442 = vld [vmem:[#allocation2 + $0xaa] sm:$0xff]
  %v8443 = vld [vmem:[#allocation2 + $0xb2] sm:$0xff]
  %v8444 = vld [vmem:[#allocation2 + $0xc2] sm:$0xff]
  %v8445 = vld [vmem:[#allocation2 + $0xca] sm:$0xff]
  %v8446 = vld [vmem:[#allocation2 + $0xda] sm:$0xff]
  %v8447 = vld [vmem:[#allocation2 + $0xe2] sm:$0xff]
  %v8448 = vld [vmem:[#allocation2 + $0xf2] sm:$0xff]
  %v8449 = vld [vmem:[#allocation2 + $0xfa] sm:$0xff]
  %v8450 = vld [vmem:[#allocation2 + $0x10a] sm:$0xff]
  %v8451 = vld [vmem:[#allocation2 + $0x112] sm:$0xff]
  %v8452 = vld [vmem:[#allocation2 + $0x122] sm:$0xff]
  %v8453 = vld [vmem:[#allocation2 + $0x12a] sm:$0xff]
  %v8454 = vld [vmem:[#allocation2 + $0x13a] sm:$0xff]
  %v8455 = vld [vmem:[#allocation2 + $0x142] sm:$0xff]
  %v8456 = vld [vmem:[#allocation2 + $0x152] sm:$0xff]
  %v8457 = vld [vmem:[#allocation2 + $0x15a] sm:$0xff]
  %v8458 = vld [vmem:[#allocation2 + $0x16a] sm:$0xff]
  %v8459 = vld [vmem:[#allocation2 + $0x172] sm:$0xff]
  %v8460 = vld [vmem:[#allocation2 + $0x1b2] sm:$0xff]
  %v8461 = vld [vmem:[#allocation2 + $0x1ba] sm:$0xff]
  %v8462 = vld [vmem:[#allocation2 + $0x1ca] sm:$0xff]
  %v8463 = vld [vmem:[#allocation2 + $0x1d2] sm:$0xff]
  %v8464 = vld [vmem:[#allocation2 + $0x1e2] sm:$0xff]
  %v8465 = vld [vmem:[#allocation2 + $0x1ea] sm:$0xff]
  %v8466 = vld [vmem:[#allocation2 + $0x1fa] sm:$0xff]
  %v8467 = vld [vmem:[#allocation2 + $0x202] sm:$0xff]
  %v8468 = vld [vmem:[#allocation2 + $0x212] sm:$0xff]
  %v8469 = vld [vmem:[#allocation2 + $0x21a] sm:$0xff]
  %v8470 = vld [vmem:[#allocation2 + $0x22a] sm:$0xff]
  %v8471 = vld [vmem:[#allocation2 + $0x232] sm:$0xff]
  %v8472 = vld [vmem:[#allocation2 + $0x242] sm:$0xff]
  %v8473 = vld [vmem:[#allocation2 + $0x24a] sm:$0xff]
  %v8474 = vld [vmem:[#allocation2 + $0x25a] sm:$0xff]
  %v8475 = vld [vmem:[#allocation2 + $0x262] sm:$0xff]
  %v8476 = vld [vmem:[#allocation2 + $0x272] sm:$0xff]
  %v8477 = vld [vmem:[#allocation2 + $0x27a] sm:$0xff]
  %v8478 = vld [vmem:[#allocation2 + $0x28a] sm:$0xff]
  %v8479 = vld [vmem:[#allocation2 + $0x292] sm:$0xff]
  %v8480 = vld [vmem:[#allocation2 + $0x2a2] sm:$0xff]
  %v8481 = vld [vmem:[#allocation2 + $0x2aa] sm:$0xff]
  %v8482 = vld [vmem:[#allocation2 + $0x2ba] sm:$0xff]
  %v8483 = vld [vmem:[#allocation2 + $0x2c2] sm:$0xff]
  %v8484 = vld [vmem:[#allocation2 + $0x2d2] sm:$0xff]
  %v8485 = vld [vmem:[#allocation2 + $0x2da] sm:$0xff]
  %v8486 = vld [vmem:[#allocation2 + $0x2ea] sm:$0xff]
  %v8487 = vld [vmem:[#allocation2 + $0x2f2] sm:$0xff]
  %v8488 = vld [vmem:[#allocation2 + $0x302] sm:$0xff]
  %v8489 = vld [vmem:[#allocation2 + $0x30a] sm:$0xff]
  %v8490 = vld [vmem:[#allocation2 + $0x31a] sm:$0xff]
  %v8491 = vld [vmem:[#allocation2 + $0x322] sm:$0xff]
  %s8492 = scalar_lea.vmem %s4, 8
  %v8493 = vld [vmem:[%s8492] sm:$0xf]
  %v8495 = vsel %vm26, %v8428, 0
  %v8498 = vsel %vm26, %v8429, 0
  %v8501 = vsel %vm26, %v8430, 0
  %v8504 = vsel %vm26, %v8431, 0
  %v8507 = vsel %vm26, %v8432, 0
  %v8510 = vsel %vm26, %v8433, 0
  %v8513 = vsel %vm26, %v8434, 0
  %v8516 = vsel %vm26, %v8435, 0
  %v8519 = vsel %vm26, %v8436, 0
  %v8522 = vsel %vm26, %v8437, 0
  %v8525 = vsel %vm26, %v8438, 0
  %v8528 = vsel %vm26, %v8439, 0
  %v8531 = vsel %vm26, %v8440, 0
  %v8534 = vsel %vm26, %v8441, 0
  %v8537 = vsel %vm26, %v8442, 0
  %v8540 = vsel %vm26, %v8443, 0
  %v8543 = vsel %vm26, %v8444, 0
  %v8546 = vsel %vm26, %v8445, 0
  %v8549 = vsel %vm26, %v8446, 0
  %v8552 = vsel %vm26, %v8447, 0
  %v8555 = vsel %vm26, %v8448, 0
  %v8558 = vsel %vm26, %v8449, 0
  %v8561 = vsel %vm26, %v8450, 0
  %v8564 = vsel %vm26, %v8451, 0
  %v8567 = vsel %vm26, %v8452, 0
  %v8570 = vsel %vm26, %v8453, 0
  %v8573 = vsel %vm26, %v8454, 0
  %v8576 = vsel %vm26, %v8455, 0
  %v8579 = vsel %vm26, %v8456, 0
  %v8582 = vsel %vm26, %v8457, 0
  %v8585 = vsel %vm26, %v8458, 0
  %v8588 = vsel %vm26, %v8459, 0
  %v8591 = vsel %vm26, %v8460, 0
  %v8594 = vsel %vm26, %v8461, 0
  %v8597 = vsel %vm26, %v8462, 0
  %v8600 = vsel %vm26, %v8463, 0
  %v8603 = vsel %vm26, %v8464, 0
  %v8606 = vsel %vm26, %v8465, 0
  %v8609 = vsel %vm26, %v8466, 0
  %v8612 = vsel %vm26, %v8467, 0
  %v8615 = vsel %vm26, %v8468, 0
  %v8618 = vsel %vm26, %v8469, 0
  %v8621 = vsel %vm26, %v8470, 0
  %v8624 = vsel %vm26, %v8471, 0
  %v8627 = vsel %vm26, %v8472, 0
  %v8630 = vsel %vm26, %v8473, 0
  %v8633 = vsel %vm26, %v8474, 0
  %v8636 = vsel %vm26, %v8475, 0
  %v8639 = vsel %vm26, %v8476, 0
  %v8642 = vsel %vm26, %v8477, 0
  %v8645 = vsel %vm26, %v8478, 0
  %v8648 = vsel %vm26, %v8479, 0
  %v8651 = vsel %vm26, %v8480, 0
  %v8654 = vsel %vm26, %v8481, 0
  %v8657 = vsel %vm26, %v8482, 0
  %v8660 = vsel %vm26, %v8483, 0
  %v8663 = vsel %vm26, %v8484, 0
  %v8666 = vsel %vm26, %v8485, 0
  %v8669 = vsel %vm26, %v8486, 0
  %v8672 = vsel %vm26, %v8487, 0
  %v8675 = vsel %vm26, %v8488, 0
  %v8678 = vsel %vm26, %v8489, 0
  %v8681 = vsel %vm26, %v8490, 0
  %v8684 = vsel %vm26, %v8491, 0
  %v8687 = vsel %vm588, %v8493, 0
  %8689 = vmatprep.subr.mxu0 0.0
  %8690 = vmatpush1.msra.mxu0 %v8687
  %8691 = vmatprep.subr.mxu0 0.0
  %8692 = vmatpush1.msra.mxu0 0.0
  %8693 = vmatprep.subr.mxu0 0.0
  %8694 = vmatpush1.msra.mxu0 0.0
  %8695 = vmatprep.subr.mxu0 0.0
  %8696 = vmatpush1.msra.mxu0 0.0
  %8697 = vmatprep.subr.mxu0 0.0
  %8698 = vmatpush1.msra.mxu0 0.0
  %8699 = vmatprep.subr.mxu0 0.0
  %8700 = vmatpush1.msra.mxu0 0.0
  %8701 = vmatprep.subr.mxu0 0.0
  %8702 = vmatpush1.msra.mxu0 0.0
  %8703 = vmatprep.subr.mxu0 0.0
  %8704 = vmatpush1.msra.mxu0 0.0
  %8705 = vmatprep.subr.mxu0 0.0
  %8706 = vmatpush1.msra.mxu0 0.0
  %8707 = vmatprep.subr.mxu0 0.0
  %8708 = vmatpush1.msra.mxu0 0.0
  %8709 = vmatprep.subr.mxu0 0.0
  %8710 = vmatpush1.msra.mxu0 0.0
  %8711 = vmatprep.subr.mxu0 0.0
  %8712 = vmatpush1.msra.mxu0 0.0
  %8713 = vmatprep.subr.mxu0 0.0
  %8714 = vmatpush1.msra.mxu0 0.0
  %8715 = vmatprep.subr.mxu0 0.0
  %8716 = vmatpush1.msra.mxu0 0.0
  %8717 = vmatprep.subr.mxu0 0.0
  %8718 = vmatpush1.msra.mxu0 0.0
  %8719 = vmatprep.subr.mxu0 0.0
  %8720 = vmatpush1.msra.mxu0 0.0
  %8721 = vmatprep.subr.mxu0 0.0
  %8722 = vmatpush1.msra.mxu0 0.0
  %8723 = vmatprep.subr.mxu0 0.0
  %8724 = vmatpush1.msra.mxu0 0.0
  %8725 = vmatprep.subr.mxu0 0.0
  %8726 = vmatpush1.msra.mxu0 0.0
  %8727 = vmatprep.subr.mxu0 0.0
  %8728 = vmatpush1.msra.mxu0 0.0
  %8729 = vmatprep.subr.mxu0 0.0
  %8730 = vmatpush1.msra.mxu0 0.0
  %8731 = vmatprep.subr.mxu0 0.0
  %8732 = vmatpush1.msra.mxu0 0.0
  %8733 = vmatprep.subr.mxu0 0.0
  %8734 = vmatpush1.msra.mxu0 0.0
  %8735 = vmatprep.subr.mxu0 0.0
  %8736 = vmatpush1.msra.mxu0 0.0
  %8737 = vmatprep.subr.mxu0 0.0
  %8738 = vmatpush1.msra.mxu0 0.0
  %8739 = vmatprep.subr.mxu0 0.0
  %8740 = vmatpush1.msra.mxu0 0.0
  %8741 = vmatprep.subr.mxu0 0.0
  %8742 = vmatpush1.msra.mxu0 0.0
  %8743 = vmatprep.subr.mxu0 0.0
  %8744 = vmatpush1.msra.mxu0 0.0
  %8745 = vmatprep.subr.mxu0 0.0
  %8746 = vmatpush1.msra.mxu0 0.0
  %8747 = vmatprep.subr.mxu0 0.0
  %8748 = vmatpush1.msra.mxu0 0.0
  %8749 = vmatprep.subr.mxu0 0.0
  %8750 = vmatpush1.msra.mxu0 0.0
  %8751 = vmatprep.subr.mxu0 0.0
  %8752 = vmatpush1.msra.mxu0 0.0
  %8753 = vmatprep.mubr.f32.mxu0 0.0
  %8754 = vmatmul.mubr.f32.gmra.mrb[0].mxu0 %v8495
  %v8755 = vpop.f32.mrb[0].mxu0
  %v8756 = vadd.f32 0.0, %v8755
  %v8757 = vpop.f32.mrb[0].mxu0
  %8758 = vmatprep.mubr.f32.mxu0 0.0
  %8759 = vmatmul.mubr.f32.gmra.mrb[0].mxu0 %v8498
  %v8760 = vpop.f32.mrb[0].mxu0
  %v8761 = vadd.f32 0.0, %v8760
  %v8762 = vpop.f32.mrb[0].mxu0
  %8763 = vmatprep.mubr.f32.mxu0 0.0
  %8764 = vmatmul.mubr.f32.gmra.mrb[0].mxu0 %v8501
  %v8765 = vpop.f32.mrb[0].mxu0
  %v8766 = vadd.f32 0.0, %v8765
  %v8767 = vpop.f32.mrb[0].mxu0
  %8768 = vmatprep.mubr.f32.mxu0 0.0
  %8769 = vmatmul.mubr.f32.gmra.mrb[0].mxu0 %v8504
  %v8770 = vpop.f32.mrb[0].mxu0
  %v8771 = vadd.f32 0.0, %v8770
  %v8772 = vpop.f32.mrb[0].mxu0
  %8773 = vmatprep.mubr.f32.mxu0 0.0
  %8774 = vmatmul.mubr.f32.gmra.mrb[0].mxu0 %v8507
  %v8775 = vpop.f32.mrb[0].mxu0
  %v8776 = vadd.f32 0.0, %v8775
  %v8777 = vpop.f32.mrb[0].mxu0
  %8778 = vmatprep.mubr.f32.mxu0 0.0
  %8779 = vmatmul.mubr.f32.gmra.mrb[0].mxu0 %v8510
  %v8780 = vpop.f32.mrb[0].mxu0
  %v8781 = vadd.f32 0.0, %v8780
  %v8782 = vpop.f32.mrb[0].mxu0
  %8783 = vmatprep.mubr.f32.mxu0 0.0
  %8784 = vmatmul.mubr.f32.gmra.mrb[0].mxu0 %v8513
  %v8785 = vpop.f32.mrb[0].mxu0
  %v8786 = vadd.f32 0.0, %v8785
  %v8787 = vpop.f32.mrb[0].mxu0
  %8788 = vmatprep.mubr.f32.mxu0 0.0
  %8789 = vmatmul.mubr.f32.gmra.mrb[0].mxu0 %v8516
  %v8790 = vpop.f32.mrb[0].mxu0
  %v8791 = vadd.f32 0.0, %v8790
  %v8792 = vpop.f32.mrb[0].mxu0
  %8793 = vmatprep.mubr.f32.mxu0 0.0
  %8794 = vmatmul.mubr.f32.gmra.mrb[0].mxu0 %v8519
  %v8795 = vpop.f32.mrb[0].mxu0
  %v8796 = vadd.f32 0.0, %v8795
  %v8797 = vpop.f32.mrb[0].mxu0
  %8798 = vmatprep.mubr.f32.mxu0 0.0
  %8799 = vmatmul.mubr.f32.gmra.mrb[0].mxu0 %v8522
  %v8800 = vpop.f32.mrb[0].mxu0
  %v8801 = vadd.f32 0.0, %v8800
  %v8802 = vpop.f32.mrb[0].mxu0
  %8803 = vmatprep.mubr.f32.mxu0 0.0
  %8804 = vmatmul.mubr.f32.gmra.mrb[0].mxu0 %v8525
  %v8805 = vpop.f32.mrb[0].mxu0
  %v8806 = vadd.f32 0.0, %v8805
  %v8807 = vpop.f32.mrb[0].mxu0
  %8808 = vmatprep.mubr.f32.mxu0 0.0
  %8809 = vmatmul.mubr.f32.gmra.mrb[0].mxu0 %v8528
  %v8810 = vpop.f32.mrb[0].mxu0
  %v8811 = vadd.f32 0.0, %v8810
  %v8812 = vpop.f32.mrb[0].mxu0
  %8813 = vmatprep.mubr.f32.mxu0 0.0
  %8814 = vmatmul.mubr.f32.gmra.mrb[0].mxu0 %v8531
  %v8815 = vpop.f32.mrb[0].mxu0
  %v8816 = vadd.f32 0.0, %v8815
  %v8817 = vpop.f32.mrb[0].mxu0
  %8818 = vmatprep.mubr.f32.mxu0 0.0
  %8819 = vmatmul.mubr.f32.gmra.mrb[0].mxu0 %v8534
  %v8820 = vpop.f32.mrb[0].mxu0
  %v8821 = vadd.f32 0.0, %v8820
  %v8822 = vpop.f32.mrb[0].mxu0
  %8823 = vmatprep.mubr.f32.mxu0 0.0
  %8824 = vmatmul.mubr.f32.gmra.mrb[0].mxu0 %v8537
  %v8825 = vpop.f32.mrb[0].mxu0
  %v8826 = vadd.f32 0.0, %v8825
  %v8827 = vpop.f32.mrb[0].mxu0
  %8828 = vmatprep.mubr.f32.mxu0 0.0
  %8829 = vmatmul.mubr.f32.gmra.mrb[0].mxu0 %v8540
  %v8830 = vpop.f32.mrb[0].mxu0
  %v8831 = vadd.f32 0.0, %v8830
  %v8832 = vpop.f32.mrb[0].mxu0
  %8833 = vmatprep.mubr.f32.mxu0 0.0
  %8834 = vmatmul.mubr.f32.gmra.mrb[0].mxu0 %v8543
  %v8835 = vpop.f32.mrb[0].mxu0
  %v8836 = vadd.f32 0.0, %v8835
  %v8837 = vpop.f32.mrb[0].mxu0
  %8838 = vmatprep.mubr.f32.mxu0 0.0
  %8839 = vmatmul.mubr.f32.gmra.mrb[0].mxu0 %v8546
  %v8840 = vpop.f32.mrb[0].mxu0
  %v8841 = vadd.f32 0.0, %v8840
  %v8842 = vpop.f32.mrb[0].mxu0
  %8843 = vmatprep.mubr.f32.mxu0 0.0
  %8844 = vmatmul.mubr.f32.gmra.mrb[0].mxu0 %v8549
  %v8845 = vpop.f32.mrb[0].mxu0
  %v8846 = vadd.f32 0.0, %v8845
  %v8847 = vpop.f32.mrb[0].mxu0
  %8848 = vmatprep.mubr.f32.mxu0 0.0
  %8849 = vmatmul.mubr.f32.gmra.mrb[0].mxu0 %v8552
  %v8850 = vpop.f32.mrb[0].mxu0
  %v8851 = vadd.f32 0.0, %v8850
  %v8852 = vpop.f32.mrb[0].mxu0
  %8853 = vmatprep.mubr.f32.mxu0 0.0
  %8854 = vmatmul.mubr.f32.gmra.mrb[0].mxu0 %v8555
  %v8855 = vpop.f32.mrb[0].mxu0
  %v8856 = vadd.f32 0.0, %v8855
  %v8857 = vpop.f32.mrb[0].mxu0
  %8858 = vmatprep.mubr.f32.mxu0 0.0
  %8859 = vmatmul.mubr.f32.gmra.mrb[0].mxu0 %v8558
  %v8860 = vpop.f32.mrb[0].mxu0
  %v8861 = vadd.f32 0.0, %v8860
  %v8862 = vpop.f32.mrb[0].mxu0
  %8863 = vmatprep.mubr.f32.mxu0 0.0
  %8864 = vmatmul.mubr.f32.gmra.mrb[0].mxu0 %v8561
  %v8865 = vpop.f32.mrb[0].mxu0
  %v8866 = vadd.f32 0.0, %v8865
  %v8867 = vpop.f32.mrb[0].mxu0
  %8868 = vmatprep.mubr.f32.mxu0 0.0
  %8869 = vmatmul.mubr.f32.gmra.mrb[0].mxu0 %v8564
  %v8870 = vpop.f32.mrb[0].mxu0
  %v8871 = vadd.f32 0.0, %v8870
  %v8872 = vpop.f32.mrb[0].mxu0
  %8873 = vmatprep.mubr.f32.mxu0 0.0
  %8874 = vmatmul.mubr.f32.gmra.mrb[0].mxu0 %v8567
  %v8875 = vpop.f32.mrb[0].mxu0
  %v8876 = vadd.f32 0.0, %v8875
  %v8877 = vpop.f32.mrb[0].mxu0
  %8878 = vmatprep.mubr.f32.mxu0 0.0
  %8879 = vmatmul.mubr.f32.gmra.mrb[0].mxu0 %v8570
  %v8880 = vpop.f32.mrb[0].mxu0
  %v8881 = vadd.f32 0.0, %v8880
  %v8882 = vpop.f32.mrb[0].mxu0
  %8883 = vmatprep.mubr.f32.mxu0 0.0
  %8884 = vmatmul.mubr.f32.gmra.mrb[0].mxu0 %v8573
  %v8885 = vpop.f32.mrb[0].mxu0
  %v8886 = vadd.f32 0.0, %v8885
  %v8887 = vpop.f32.mrb[0].mxu0
  %8888 = vmatprep.mubr.f32.mxu0 0.0
  %8889 = vmatmul.mubr.f32.gmra.mrb[0].mxu0 %v8576
  %v8890 = vpop.f32.mrb[0].mxu0
  %v8891 = vadd.f32 0.0, %v8890
  %v8892 = vpop.f32.mrb[0].mxu0
  %8893 = vmatprep.mubr.f32.mxu0 0.0
  %8894 = vmatmul.mubr.f32.gmra.mrb[0].mxu0 %v8579
  %v8895 = vpop.f32.mrb[0].mxu0
  %v8896 = vadd.f32 0.0, %v8895
  %v8897 = vpop.f32.mrb[0].mxu0
  %8898 = vmatprep.mubr.f32.mxu0 0.0
  %8899 = vmatmul.mubr.f32.gmra.mrb[0].mxu0 %v8582
  %v8900 = vpop.f32.mrb[0].mxu0
  %v8901 = vadd.f32 0.0, %v8900
  %v8902 = vpop.f32.mrb[0].mxu0
  %8903 = vmatprep.mubr.f32.mxu0 0.0
  %8904 = vmatmul.mubr.f32.gmra.mrb[0].mxu0 %v8585
  %v8905 = vpop.f32.mrb[0].mxu0
  %v8906 = vadd.f32 0.0, %v8905
  %v8907 = vpop.f32.mrb[0].mxu0
  %8908 = vmatprep.mubr.f32.mxu0 0.0
  %8909 = vmatmul.mubr.f32.gmra.mrb[0].mxu0 %v8588
  %v8910 = vpop.f32.mrb[0].mxu0
  %v8911 = vadd.f32 0.0, %v8910
  %v8912 = vpop.f32.mrb[0].mxu0
  %8913 = vmatprep.mubr.f32.mxu0 0.0
  %8914 = vmatmul.mubr.f32.gmra.mrb[0].mxu0 %v8591
  %v8915 = vpop.f32.mrb[0].mxu0
  %v8916 = vadd.f32 0.0, %v8915
  %v8917 = vpop.f32.mrb[0].mxu0
  %8918 = vmatprep.mubr.f32.mxu0 0.0
  %8919 = vmatmul.mubr.f32.gmra.mrb[0].mxu0 %v8594
  %v8920 = vpop.f32.mrb[0].mxu0
  %v8921 = vadd.f32 0.0, %v8920
  %v8922 = vpop.f32.mrb[0].mxu0
  %8923 = vmatprep.mubr.f32.mxu0 0.0
  %8924 = vmatmul.mubr.f32.gmra.mrb[0].mxu0 %v8597
  %v8925 = vpop.f32.mrb[0].mxu0
  %v8926 = vadd.f32 0.0, %v8925
  %v8927 = vpop.f32.mrb[0].mxu0
  %8928 = vmatprep.mubr.f32.mxu0 0.0
  %8929 = vmatmul.mubr.f32.gmra.mrb[0].mxu0 %v8600
  %v8930 = vpop.f32.mrb[0].mxu0
  %v8931 = vadd.f32 0.0, %v8930
  %v8932 = vpop.f32.mrb[0].mxu0
  %8933 = vmatprep.mubr.f32.mxu0 0.0
  %8934 = vmatmul.mubr.f32.gmra.mrb[0].mxu0 %v8603
  %v8935 = vpop.f32.mrb[0].mxu0
  %v8936 = vadd.f32 0.0, %v8935
  %v8937 = vpop.f32.mrb[0].mxu0
  %8938 = vmatprep.mubr.f32.mxu0 0.0
  %8939 = vmatmul.mubr.f32.gmra.mrb[0].mxu0 %v8606
  %v8940 = vpop.f32.mrb[0].mxu0
  %v8941 = vadd.f32 0.0, %v8940
  %v8942 = vpop.f32.mrb[0].mxu0
  %8943 = vmatprep.mubr.f32.mxu0 0.0
  %8944 = vmatmul.mubr.f32.gmra.mrb[0].mxu0 %v8609
  %v8945 = vpop.f32.mrb[0].mxu0
  %v8946 = vadd.f32 0.0, %v8945
  %v8947 = vpop.f32.mrb[0].mxu0
  %8948 = vmatprep.mubr.f32.mxu0 0.0
  %8949 = vmatmul.mubr.f32.gmra.mrb[0].mxu0 %v8612
  %v8950 = vpop.f32.mrb[0].mxu0
  %v8951 = vadd.f32 0.0, %v8950
  %v8952 = vpop.f32.mrb[0].mxu0
  %8953 = vmatprep.mubr.f32.mxu0 0.0
  %8954 = vmatmul.mubr.f32.gmra.mrb[0].mxu0 %v8615
  %v8955 = vpop.f32.mrb[0].mxu0
  %v8956 = vadd.f32 0.0, %v8955
  %v8957 = vpop.f32.mrb[0].mxu0
  %8958 = vmatprep.mubr.f32.mxu0 0.0
  %8959 = vmatmul.mubr.f32.gmra.mrb[0].mxu0 %v8618
  %v8960 = vpop.f32.mrb[0].mxu0
  %v8961 = vadd.f32 0.0, %v8960
  %v8962 = vpop.f32.mrb[0].mxu0
  %8963 = vmatprep.mubr.f32.mxu0 0.0
  %8964 = vmatmul.mubr.f32.gmra.mrb[0].mxu0 %v8621
  %v8965 = vpop.f32.mrb[0].mxu0
  %v8966 = vadd.f32 0.0, %v8965
  %v8967 = vpop.f32.mrb[0].mxu0
  %8968 = vmatprep.mubr.f32.mxu0 0.0
  %8969 = vmatmul.mubr.f32.gmra.mrb[0].mxu0 %v8624
  %v8970 = vpop.f32.mrb[0].mxu0
  %v8971 = vadd.f32 0.0, %v8970
  %v8972 = vpop.f32.mrb[0].mxu0
  %8973 = vmatprep.mubr.f32.mxu0 0.0
  %8974 = vmatmul.mubr.f32.gmra.mrb[0].mxu0 %v8627
  %v8975 = vpop.f32.mrb[0].mxu0
  %v8976 = vadd.f32 0.0, %v8975
  %v8977 = vpop.f32.mrb[0].mxu0
  %8978 = vmatprep.mubr.f32.mxu0 0.0
  %8979 = vmatmul.mubr.f32.gmra.mrb[0].mxu0 %v8630
  %v8980 = vpop.f32.mrb[0].mxu0
  %v8981 = vadd.f32 0.0, %v8980
  %v8982 = vpop.f32.mrb[0].mxu0
  %8983 = vmatprep.mubr.f32.mxu0 0.0
  %8984 = vmatmul.mubr.f32.gmra.mrb[0].mxu0 %v8633
  %v8985 = vpop.f32.mrb[0].mxu0
  %v8986 = vadd.f32 0.0, %v8985
  %v8987 = vpop.f32.mrb[0].mxu0
  %8988 = vmatprep.mubr.f32.mxu0 0.0
  %8989 = vmatmul.mubr.f32.gmra.mrb[0].mxu0 %v8636
  %v8990 = vpop.f32.mrb[0].mxu0
  %v8991 = vadd.f32 0.0, %v8990
  %v8992 = vpop.f32.mrb[0].mxu0
  %8993 = vmatprep.mubr.f32.mxu0 0.0
  %8994 = vmatmul.mubr.f32.gmra.mrb[0].mxu0 %v8639
  %v8995 = vpop.f32.mrb[0].mxu0
  %v8996 = vadd.f32 0.0, %v8995
  %v8997 = vpop.f32.mrb[0].mxu0
  %8998 = vmatprep.mubr.f32.mxu0 0.0
  %8999 = vmatmul.mubr.f32.gmra.mrb[0].mxu0 %v8642
  %v9000 = vpop.f32.mrb[0].mxu0
  %v9001 = vadd.f32 0.0, %v9000
  %v9002 = vpop.f32.mrb[0].mxu0
  %9003 = vmatprep.mubr.f32.mxu0 0.0
  %9004 = vmatmul.mubr.f32.gmra.mrb[0].mxu0 %v8645
  %v9005 = vpop.f32.mrb[0].mxu0
  %v9006 = vadd.f32 0.0, %v9005
  %v9007 = vpop.f32.mrb[0].mxu0
  %9008 = vmatprep.mubr.f32.mxu0 0.0
  %9009 = vmatmul.mubr.f32.gmra.mrb[0].mxu0 %v8648
  %v9010 = vpop.f32.mrb[0].mxu0
  %v9011 = vadd.f32 0.0, %v9010
  %v9012 = vpop.f32.mrb[0].mxu0
  %9013 = vmatprep.mubr.f32.mxu0 0.0
  %9014 = vmatmul.mubr.f32.gmra.mrb[0].mxu0 %v8651
  %v9015 = vpop.f32.mrb[0].mxu0
  %v9016 = vadd.f32 0.0, %v9015
  %v9017 = vpop.f32.mrb[0].mxu0
  %9018 = vmatprep.mubr.f32.mxu0 0.0
  %9019 = vmatmul.mubr.f32.gmra.mrb[0].mxu0 %v8654
  %v9020 = vpop.f32.mrb[0].mxu0
  %v9021 = vadd.f32 0.0, %v9020
  %v9022 = vpop.f32.mrb[0].mxu0
  %9023 = vmatprep.mubr.f32.mxu0 0.0
  %9024 = vmatmul.mubr.f32.gmra.mrb[0].mxu0 %v8657
  %v9025 = vpop.f32.mrb[0].mxu0
  %v9026 = vadd.f32 0.0, %v9025
  %v9027 = vpop.f32.mrb[0].mxu0
  %9028 = vmatprep.mubr.f32.mxu0 0.0
  %9029 = vmatmul.mubr.f32.gmra.mrb[0].mxu0 %v8660
  %v9030 = vpop.f32.mrb[0].mxu0
  %v9031 = vadd.f32 0.0, %v9030
  %v9032 = vpop.f32.mrb[0].mxu0
  %9033 = vmatprep.mubr.f32.mxu0 0.0
  %9034 = vmatmul.mubr.f32.gmra.mrb[0].mxu0 %v8663
  %v9035 = vpop.f32.mrb[0].mxu0
  %v9036 = vadd.f32 0.0, %v9035
  %v9037 = vpop.f32.mrb[0].mxu0
  %9038 = vmatprep.mubr.f32.mxu0 0.0
  %9039 = vmatmul.mubr.f32.gmra.mrb[0].mxu0 %v8666
  %v9040 = vpop.f32.mrb[0].mxu0
  %v9041 = vadd.f32 0.0, %v9040
  %v9042 = vpop.f32.mrb[0].mxu0
  %9043 = vmatprep.mubr.f32.mxu0 0.0
  %9044 = vmatmul.mubr.f32.gmra.mrb[0].mxu0 %v8669
  %v9045 = vpop.f32.mrb[0].mxu0
  %v9046 = vadd.f32 0.0, %v9045
  %v9047 = vpop.f32.mrb[0].mxu0
  %9048 = vmatprep.mubr.f32.mxu0 0.0
  %9049 = vmatmul.mubr.f32.gmra.mrb[0].mxu0 %v8672
  %v9050 = vpop.f32.mrb[0].mxu0
  %v9051 = vadd.f32 0.0, %v9050
  %v9052 = vpop.f32.mrb[0].mxu0
  %9053 = vmatprep.mubr.f32.mxu0 0.0
  %9054 = vmatmul.mubr.f32.gmra.mrb[0].mxu0 %v8675
  %v9055 = vpop.f32.mrb[0].mxu0
  %v9056 = vadd.f32 0.0, %v9055
  %v9057 = vpop.f32.mrb[0].mxu0
  %9058 = vmatprep.mubr.f32.mxu0 0.0
  %9059 = vmatmul.mubr.f32.gmra.mrb[0].mxu0 %v8678
  %v9060 = vpop.f32.mrb[0].mxu0
  %v9061 = vadd.f32 0.0, %v9060
  %v9062 = vpop.f32.mrb[0].mxu0
  %9063 = vmatprep.mubr.f32.mxu0 0.0
  %9064 = vmatmul.mubr.f32.gmra.mrb[0].mxu0 %v8681
  %v9065 = vpop.f32.mrb[0].mxu0
  %v9066 = vadd.f32 0.0, %v9065
  %v9067 = vpop.f32.mrb[0].mxu0
  %9068 = vmatprep.mubr.f32.mxu0 0.0
  %9069 = vmatmul.mubr.f32.gmra.mrb[0].mxu0 %v8684
  %v9070 = vpop.f32.mrb[0].mxu0
  %v9071 = vadd.f32 0.0, %v9070
  %v9072 = vpop.f32.mrb[0].mxu0
  %9073 = vdwg.mxu0
  %v9074 = vadd.f32 %v8110, %v8756
  %v9075 = vadd.f32 %v8115, %v8761
  %v9076 = vadd.f32 %v8120, %v8766
  %v9077 = vadd.f32 %v8125, %v8771
  %v9078 = vadd.f32 %v8130, %v8776
  %v9079 = vadd.f32 %v8135, %v8781
  %v9080 = vadd.f32 %v8140, %v8786
  %v9081 = vadd.f32 %v8145, %v8791
  %v9082 = vadd.f32 %v8150, %v8796
  %v9083 = vadd.f32 %v8155, %v8801
  %v9084 = vadd.f32 %v8160, %v8806
  %v9085 = vadd.f32 %v8165, %v8811
  %v9086 = vadd.f32 %v8170, %v8816
  %v9087 = vadd.f32 %v8175, %v8821
  %v9088 = vadd.f32 %v8180, %v8826
  %v9089 = vadd.f32 %v8185, %v8831
  %v9090 = vadd.f32 %v8190, %v8836
  %v9091 = vadd.f32 %v8195, %v8841
  %v9092 = vadd.f32 %v8200, %v8846
  %v9093 = vadd.f32 %v8205, %v8851
  %v9094 = vadd.f32 %v8210, %v8856
  %v9095 = vadd.f32 %v8215, %v8861
  %v9096 = vadd.f32 %v8220, %v8866
  %v9097 = vadd.f32 %v8225, %v8871
  %v9098 = vadd.f32 %v8230, %v8876
  %v9099 = vadd.f32 %v8235, %v8881
  %v9100 = vadd.f32 %v8240, %v8886
  %v9101 = vadd.f32 %v8245, %v8891
  %v9102 = vadd.f32 %v8250, %v8896
  %v9103 = vadd.f32 %v8255, %v8901
  %v9104 = vadd.f32 %v8260, %v8906
  %v9105 = vadd.f32 %v8265, %v8911
  %v9106 = vadd.f32 %v8270, %v8916
  %v9107 = vadd.f32 %v8275, %v8921
  %v9108 = vadd.f32 %v8280, %v8926
  %v9109 = vadd.f32 %v8285, %v8931
  %v9110 = vadd.f32 %v8290, %v8936
  %v9111 = vadd.f32 %v8295, %v8941
  %v9112 = vadd.f32 %v8300, %v8946
  %v9113 = vadd.f32 %v8305, %v8951
  %v9114 = vadd.f32 %v8310, %v8956
  %v9115 = vadd.f32 %v8315, %v8961
  %v9116 = vadd.f32 %v8320, %v8966
  %v9117 = vadd.f32 %v8325, %v8971
  %v9118 = vadd.f32 %v8330, %v8976
  %v9119 = vadd.f32 %v8335, %v8981
  %v9120 = vadd.f32 %v8340, %v8986
  %v9121 = vadd.f32 %v8345, %v8991
  %v9122 = vadd.f32 %v8350, %v8996
  %v9123 = vadd.f32 %v8355, %v9001
  %v9124 = vadd.f32 %v8360, %v9006
  %v9125 = vadd.f32 %v8365, %v9011
  %v9126 = vadd.f32 %v8370, %v9016
  %v9127 = vadd.f32 %v8375, %v9021
  %v9128 = vadd.f32 %v8380, %v9026
  %v9129 = vadd.f32 %v8385, %v9031
  %v9130 = vadd.f32 %v8390, %v9036
  %v9131 = vadd.f32 %v8395, %v9041
  %v9132 = vadd.f32 %v8400, %v9046
  %v9133 = vadd.f32 %v8405, %v9051
  %v9134 = vadd.f32 %v8410, %v9056
  %v9135 = vadd.f32 %v8415, %v9061
  %v9136 = vadd.f32 %v8420, %v9066
  %v9137 = vadd.f32 %v8425, %v9071
  %v9138 = vld [vmem:[%s200] sm:$0xff]
  %v9139 = vld [vmem:[%s200 + $0x8] sm:$0xff]
  %v9140 = vld [vmem:[%s200 + $0x18] sm:$0xff]
  %v9141 = vld [vmem:[%s200 + $0x20] sm:$0xff]
  %v9142 = vld [vmem:[%s200 + $0x30] sm:$0xff]
  %v9143 = vld [vmem:[%s200 + $0x38] sm:$0xff]
  %v9144 = vld [vmem:[%s200 + $0x48] sm:$0xff]
  %v9145 = vld [vmem:[%s200 + $0x50] sm:$0xff]
  %v9146 = vld [vmem:[%s200 + $0x60] sm:$0xff]
  %v9147 = vld [vmem:[%s200 + $0x68] sm:$0xff]
  %v9148 = vld [vmem:[%s200 + $0x78] sm:$0xff]
  %v9149 = vld [vmem:[%s200 + $0x80] sm:$0xff]
  %v9150 = vld [vmem:[%s200 + $0x90] sm:$0xff]
  %v9151 = vld [vmem:[%s200 + $0x98] sm:$0xff]
  %v9152 = vld [vmem:[%s200 + $0xa8] sm:$0xff]
  %v9153 = vld [vmem:[%s200 + $0xb0] sm:$0xff]
  %v9154 = vld [vmem:[%s200 + $0xc0] sm:$0xff]
  %v9155 = vld [vmem:[%s200 + $0xc8] sm:$0xff]
  %v9156 = vld [vmem:[%s200 + $0xd8] sm:$0xff]
  %v9157 = vld [vmem:[%s200 + $0xe0] sm:$0xff]
  %v9158 = vld [vmem:[%s200 + $0xf0] sm:$0xff]
  %v9159 = vld [vmem:[%s200 + $0xf8] sm:$0xff]
  %v9160 = vld [vmem:[%s200 + $0x108] sm:$0xff]
  %v9161 = vld [vmem:[%s200 + $0x110] sm:$0xff]
  %v9162 = vld [vmem:[%s200 + $0x120] sm:$0xff]
  %v9163 = vld [vmem:[%s200 + $0x128] sm:$0xff]
  %v9164 = vld [vmem:[%s200 + $0x138] sm:$0xff]
  %v9165 = vld [vmem:[%s200 + $0x140] sm:$0xff]
  %v9166 = vld [vmem:[%s200 + $0x150] sm:$0xff]
  %v9167 = vld [vmem:[%s200 + $0x158] sm:$0xff]
  %v9168 = vld [vmem:[%s200 + $0x168] sm:$0xff]
  %v9169 = vld [vmem:[%s200 + $0x170] sm:$0xff]
  %v9170 = vld [vmem:[%s200 + $0x1b0] sm:$0xff]
  %v9171 = vld [vmem:[%s200 + $0x1b8] sm:$0xff]
  %v9172 = vld [vmem:[%s200 + $0x1c8] sm:$0xff]
  %v9173 = vld [vmem:[%s200 + $0x1d0] sm:$0xff]
  %v9174 = vld [vmem:[%s200 + $0x1e0] sm:$0xff]
  %v9175 = vld [vmem:[%s200 + $0x1e8] sm:$0xff]
  %v9176 = vld [vmem:[%s200 + $0x1f8] sm:$0xff]
  %v9177 = vld [vmem:[%s200 + $0x200] sm:$0xff]
  %v9178 = vld [vmem:[%s200 + $0x210] sm:$0xff]
  %v9179 = vld [vmem:[%s200 + $0x218] sm:$0xff]
  %v9180 = vld [vmem:[%s200 + $0x228] sm:$0xff]
  %v9181 = vld [vmem:[%s200 + $0x230] sm:$0xff]
  %v9182 = vld [vmem:[%s200 + $0x240] sm:$0xff]
  %v9183 = vld [vmem:[%s200 + $0x248] sm:$0xff]
  %v9184 = vld [vmem:[%s200 + $0x258] sm:$0xff]
  %v9185 = vld [vmem:[%s200 + $0x260] sm:$0xff]
  %v9186 = vld [vmem:[%s200 + $0x270] sm:$0xff]
  %v9187 = vld [vmem:[%s200 + $0x278] sm:$0xff]
  %v9188 = vld [vmem:[%s200 + $0x288] sm:$0xff]
  %v9189 = vld [vmem:[%s200 + $0x290] sm:$0xff]
  %v9190 = vld [vmem:[%s200 + $0x2a0] sm:$0xff]
  %v9191 = vld [vmem:[%s200 + $0x2a8] sm:$0xff]
  %v9192 = vld [vmem:[%s200 + $0x2b8] sm:$0xff]
  %v9193 = vld [vmem:[%s200 + $0x2c0] sm:$0xff]
  %v9194 = vld [vmem:[%s200 + $0x2d0] sm:$0xff]
  %v9195 = vld [vmem:[%s200 + $0x2d8] sm:$0xff]
  %v9196 = vld [vmem:[%s200 + $0x2e8] sm:$0xff]
  %v9197 = vld [vmem:[%s200 + $0x2f0] sm:$0xff]
  %v9198 = vld [vmem:[%s200 + $0x300] sm:$0xff]
  %v9199 = vld [vmem:[%s200 + $0x308] sm:$0xff]
  %v9200 = vld [vmem:[%s200 + $0x318] sm:$0xff]
  %v9201 = vld [vmem:[%s200 + $0x320] sm:$0xff]
  %s9202 = scalar_lea.vmem %s4, 12
  %v9203 = vld [vmem:[%s9202] sm:$0xf]
  %v9205 = vsel %vm26, %v9138, 0
  %v9208 = vsel %vm26, %v9139, 0
  %v9211 = vsel %vm26, %v9140, 0
  %v9214 = vsel %vm26, %v9141, 0
  %v9217 = vsel %vm26, %v9142, 0
  %v9220 = vsel %vm26, %v9143, 0
  %v9223 = vsel %vm26, %v9144, 0
  %v9226 = vsel %vm26, %v9145, 0
  %v9229 = vsel %vm26, %v9146, 0
  %v9232 = vsel %vm26, %v9147, 0
  %v9235 = vsel %vm26, %v9148, 0
  %v9238 = vsel %vm26, %v9149, 0
  %v9241 = vsel %vm26, %v9150, 0
  %v9244 = vsel %vm26, %v9151, 0
  %v9247 = vsel %vm26, %v9152, 0
  %v9250 = vsel %vm26, %v9153, 0
  %v9253 = vsel %vm26, %v9154, 0
  %v9256 = vsel %vm26, %v9155, 0
  %v9259 = vsel %vm26, %v9156, 0
  %v9262 = vsel %vm26, %v9157, 0
  %v9265 = vsel %vm26, %v9158, 0
  %v9268 = vsel %vm26, %v9159, 0
  %v9271 = vsel %vm26, %v9160, 0
  %v9274 = vsel %vm26, %v9161, 0
  %v9277 = vsel %vm26, %v9162, 0
  %v9280 = vsel %vm26, %v9163, 0
  %v9283 = vsel %vm26, %v9164, 0
  %v9286 = vsel %vm26, %v9165, 0
  %v9289 = vsel %vm26, %v9166, 0
  %v9292 = vsel %vm26, %v9167, 0
  %v9295 = vsel %vm26, %v9168, 0
  %v9298 = vsel %vm26, %v9169, 0
  %v9301 = vsel %vm26, %v9170, 0
  %v9304 = vsel %vm26, %v9171, 0
  %v9307 = vsel %vm26, %v9172, 0
  %v9310 = vsel %vm26, %v9173, 0
  %v9313 = vsel %vm26, %v9174, 0
  %v9316 = vsel %vm26, %v9175, 0
  %v9319 = vsel %vm26, %v9176, 0
  %v9322 = vsel %vm26, %v9177, 0
  %v9325 = vsel %vm26, %v9178, 0
  %v9328 = vsel %vm26, %v9179, 0
  %v9331 = vsel %vm26, %v9180, 0
  %v9334 = vsel %vm26, %v9181, 0
  %v9337 = vsel %vm26, %v9182, 0
  %v9340 = vsel %vm26, %v9183, 0
  %v9343 = vsel %vm26, %v9184, 0
  %v9346 = vsel %vm26, %v9185, 0
  %v9349 = vsel %vm26, %v9186, 0
  %v9352 = vsel %vm26, %v9187, 0
  %v9355 = vsel %vm26, %v9188, 0
  %v9358 = vsel %vm26, %v9189, 0
  %v9361 = vsel %vm26, %v9190, 0
  %v9364 = vsel %vm26, %v9191, 0
  %v9367 = vsel %vm26, %v9192, 0
  %v9370 = vsel %vm26, %v9193, 0
  %v9373 = vsel %vm26, %v9194, 0
  %v9376 = vsel %vm26, %v9195, 0
  %v9379 = vsel %vm26, %v9196, 0
  %v9382 = vsel %vm26, %v9197, 0
  %v9385 = vsel %vm26, %v9198, 0
  %v9388 = vsel %vm26, %v9199, 0
  %v9391 = vsel %vm26, %v9200, 0
  %v9394 = vsel %vm26, %v9201, 0
  %v9397 = vsel %vm588, %v9203, 0
  %9399 = vmatprep.subr.mxu0 0.0
  %9400 = vmatpush1.msra.mxu0 %v9397
  %9401 = vmatprep.subr.mxu0 0.0
  %9402 = vmatpush1.msra.mxu0 0.0
  %9403 = vmatprep.subr.mxu0 0.0
  %9404 = vmatpush1.msra.mxu0 0.0
  %9405 = vmatprep.subr.mxu0 0.0
  %9406 = vmatpush1.msra.mxu0 0.0
  %9407 = vmatprep.subr.mxu0 0.0
  %9408 = vmatpush1.msra.mxu0 0.0
  %9409 = vmatprep.subr.mxu0 0.0
  %9410 = vmatpush1.msra.mxu0 0.0
  %9411 = vmatprep.subr.mxu0 0.0
  %9412 = vmatpush1.msra.mxu0 0.0
  %9413 = vmatprep.subr.mxu0 0.0
  %9414 = vmatpush1.msra.mxu0 0.0
  %9415 = vmatprep.subr.mxu0 0.0
  %9416 = vmatpush1.msra.mxu0 0.0
  %9417 = vmatprep.subr.mxu0 0.0
  %9418 = vmatpush1.msra.mxu0 0.0
  %9419 = vmatprep.subr.mxu0 0.0
  %9420 = vmatpush1.msra.mxu0 0.0
  %9421 = vmatprep.subr.mxu0 0.0
  %9422 = vmatpush1.msra.mxu0 0.0
  %9423 = vmatprep.subr.mxu0 0.0
  %9424 = vmatpush1.msra.mxu0 0.0
  %9425 = vmatprep.subr.mxu0 0.0
  %9426 = vmatpush1.msra.mxu0 0.0
  %9427 = vmatprep.subr.mxu0 0.0
  %9428 = vmatpush1.msra.mxu0 0.0
  %9429 = vmatprep.subr.mxu0 0.0
  %9430 = vmatpush1.msra.mxu0 0.0
  %9431 = vmatprep.subr.mxu0 0.0
  %9432 = vmatpush1.msra.mxu0 0.0
  %9433 = vmatprep.subr.mxu0 0.0
  %9434 = vmatpush1.msra.mxu0 0.0
  %9435 = vmatprep.subr.mxu0 0.0
  %9436 = vmatpush1.msra.mxu0 0.0
  %9437 = vmatprep.subr.mxu0 0.0
  %9438 = vmatpush1.msra.mxu0 0.0
  %9439 = vmatprep.subr.mxu0 0.0
  %9440 = vmatpush1.msra.mxu0 0.0
  %9441 = vmatprep.subr.mxu0 0.0
  %9442 = vmatpush1.msra.mxu0 0.0
  %9443 = vmatprep.subr.mxu0 0.0
  %9444 = vmatpush1.msra.mxu0 0.0
  %9445 = vmatprep.subr.mxu0 0.0
  %9446 = vmatpush1.msra.mxu0 0.0
  %9447 = vmatprep.subr.mxu0 0.0
  %9448 = vmatpush1.msra.mxu0 0.0
  %9449 = vmatprep.subr.mxu0 0.0
  %9450 = vmatpush1.msra.mxu0 0.0
  %9451 = vmatprep.subr.mxu0 0.0
  %9452 = vmatpush1.msra.mxu0 0.0
  %9453 = vmatprep.subr.mxu0 0.0
  %9454 = vmatpush1.msra.mxu0 0.0
  %9455 = vmatprep.subr.mxu0 0.0
  %9456 = vmatpush1.msra.mxu0 0.0
  %9457 = vmatprep.subr.mxu0 0.0
  %9458 = vmatpush1.msra.mxu0 0.0
  %9459 = vmatprep.subr.mxu0 0.0
  %9460 = vmatpush1.msra.mxu0 0.0
  %9461 = vmatprep.subr.mxu0 0.0
  %9462 = vmatpush1.msra.mxu0 0.0
  %9463 = vmatprep.mubr.f32.mxu0 0.0
  %9464 = vmatmul.mubr.f32.gmra.mrb[0].mxu0 %v9205
  %v9465 = vpop.f32.mrb[0].mxu0
  %v9466 = vadd.f32 0.0, %v9465
  %v9467 = vpop.f32.mrb[0].mxu0
  %9468 = vmatprep.mubr.f32.mxu0 0.0
  %9469 = vmatmul.mubr.f32.gmra.mrb[0].mxu0 %v9208
  %v9470 = vpop.f32.mrb[0].mxu0
  %v9471 = vadd.f32 0.0, %v9470
  %v9472 = vpop.f32.mrb[0].mxu0
  %9473 = vmatprep.mubr.f32.mxu0 0.0
  %9474 = vmatmul.mubr.f32.gmra.mrb[0].mxu0 %v9211
  %v9475 = vpop.f32.mrb[0].mxu0
  %v9476 = vadd.f32 0.0, %v9475
  %v9477 = vpop.f32.mrb[0].mxu0
  %9478 = vmatprep.mubr.f32.mxu0 0.0
  %9479 = vmatmul.mubr.f32.gmra.mrb[0].mxu0 %v9214
  %v9480 = vpop.f32.mrb[0].mxu0
  %v9481 = vadd.f32 0.0, %v9480
  %v9482 = vpop.f32.mrb[0].mxu0
  %9483 = vmatprep.mubr.f32.mxu0 0.0
  %9484 = vmatmul.mubr.f32.gmra.mrb[0].mxu0 %v9217
  %v9485 = vpop.f32.mrb[0].mxu0
  %v9486 = vadd.f32 0.0, %v9485
  %v9487 = vpop.f32.mrb[0].mxu0
  %9488 = vmatprep.mubr.f32.mxu0 0.0
  %9489 = vmatmul.mubr.f32.gmra.mrb[0].mxu0 %v9220
  %v9490 = vpop.f32.mrb[0].mxu0
  %v9491 = vadd.f32 0.0, %v9490
  %v9492 = vpop.f32.mrb[0].mxu0
  %9493 = vmatprep.mubr.f32.mxu0 0.0
  %9494 = vmatmul.mubr.f32.gmra.mrb[0].mxu0 %v9223
  %v9495 = vpop.f32.mrb[0].mxu0
  %v9496 = vadd.f32 0.0, %v9495
  %v9497 = vpop.f32.mrb[0].mxu0
  %9498 = vmatprep.mubr.f32.mxu0 0.0
  %9499 = vmatmul.mubr.f32.gmra.mrb[0].mxu0 %v9226
  %v9500 = vpop.f32.mrb[0].mxu0
  %v9501 = vadd.f32 0.0, %v9500
  %v9502 = vpop.f32.mrb[0].mxu0
  %9503 = vmatprep.mubr.f32.mxu0 0.0
  %9504 = vmatmul.mubr.f32.gmra.mrb[0].mxu0 %v9229
  %v9505 = vpop.f32.mrb[0].mxu0
  %v9506 = vadd.f32 0.0, %v9505
  %v9507 = vpop.f32.mrb[0].mxu0
  %9508 = vmatprep.mubr.f32.mxu0 0.0
  %9509 = vmatmul.mubr.f32.gmra.mrb[0].mxu0 %v9232
  %v9510 = vpop.f32.mrb[0].mxu0
  %v9511 = vadd.f32 0.0, %v9510
  %v9512 = vpop.f32.mrb[0].mxu0
  %9513 = vmatprep.mubr.f32.mxu0 0.0
  %9514 = vmatmul.mubr.f32.gmra.mrb[0].mxu0 %v9235
  %v9515 = vpop.f32.mrb[0].mxu0
  %v9516 = vadd.f32 0.0, %v9515
  %v9517 = vpop.f32.mrb[0].mxu0
  %9518 = vmatprep.mubr.f32.mxu0 0.0
  %9519 = vmatmul.mubr.f32.gmra.mrb[0].mxu0 %v9238
  %v9520 = vpop.f32.mrb[0].mxu0
  %v9521 = vadd.f32 0.0, %v9520
  %v9522 = vpop.f32.mrb[0].mxu0
  %9523 = vmatprep.mubr.f32.mxu0 0.0
  %9524 = vmatmul.mubr.f32.gmra.mrb[0].mxu0 %v9241
  %v9525 = vpop.f32.mrb[0].mxu0
  %v9526 = vadd.f32 0.0, %v9525
  %v9527 = vpop.f32.mrb[0].mxu0
  %9528 = vmatprep.mubr.f32.mxu0 0.0
  %9529 = vmatmul.mubr.f32.gmra.mrb[0].mxu0 %v9244
  %v9530 = vpop.f32.mrb[0].mxu0
  %v9531 = vadd.f32 0.0, %v9530
  %v9532 = vpop.f32.mrb[0].mxu0
  %9533 = vmatprep.mubr.f32.mxu0 0.0
  %9534 = vmatmul.mubr.f32.gmra.mrb[0].mxu0 %v9247
  %v9535 = vpop.f32.mrb[0].mxu0
  %v9536 = vadd.f32 0.0, %v9535
  %v9537 = vpop.f32.mrb[0].mxu0
  %9538 = vmatprep.mubr.f32.mxu0 0.0
  %9539 = vmatmul.mubr.f32.gmra.mrb[0].mxu0 %v9250
  %v9540 = vpop.f32.mrb[0].mxu0
  %v9541 = vadd.f32 0.0, %v9540
  %v9542 = vpop.f32.mrb[0].mxu0
  %9543 = vmatprep.mubr.f32.mxu0 0.0
  %9544 = vmatmul.mubr.f32.gmra.mrb[0].mxu0 %v9253
  %v9545 = vpop.f32.mrb[0].mxu0
  %v9546 = vadd.f32 0.0, %v9545
  %v9547 = vpop.f32.mrb[0].mxu0
  %9548 = vmatprep.mubr.f32.mxu0 0.0
  %9549 = vmatmul.mubr.f32.gmra.mrb[0].mxu0 %v9256
  %v9550 = vpop.f32.mrb[0].mxu0
  %v9551 = vadd.f32 0.0, %v9550
  %v9552 = vpop.f32.mrb[0].mxu0
  %9553 = vmatprep.mubr.f32.mxu0 0.0
  %9554 = vmatmul.mubr.f32.gmra.mrb[0].mxu0 %v9259
  %v9555 = vpop.f32.mrb[0].mxu0
  %v9556 = vadd.f32 0.0, %v9555
  %v9557 = vpop.f32.mrb[0].mxu0
  %9558 = vmatprep.mubr.f32.mxu0 0.0
  %9559 = vmatmul.mubr.f32.gmra.mrb[0].mxu0 %v9262
  %v9560 = vpop.f32.mrb[0].mxu0
  %v9561 = vadd.f32 0.0, %v9560
  %v9562 = vpop.f32.mrb[0].mxu0
  %9563 = vmatprep.mubr.f32.mxu0 0.0
  %9564 = vmatmul.mubr.f32.gmra.mrb[0].mxu0 %v9265
  %v9565 = vpop.f32.mrb[0].mxu0
  %v9566 = vadd.f32 0.0, %v9565
  %v9567 = vpop.f32.mrb[0].mxu0
  %9568 = vmatprep.mubr.f32.mxu0 0.0
  %9569 = vmatmul.mubr.f32.gmra.mrb[0].mxu0 %v9268
  %v9570 = vpop.f32.mrb[0].mxu0
  %v9571 = vadd.f32 0.0, %v9570
  %v9572 = vpop.f32.mrb[0].mxu0
  %9573 = vmatprep.mubr.f32.mxu0 0.0
  %9574 = vmatmul.mubr.f32.gmra.mrb[0].mxu0 %v9271
  %v9575 = vpop.f32.mrb[0].mxu0
  %v9576 = vadd.f32 0.0, %v9575
  %v9577 = vpop.f32.mrb[0].mxu0
  %9578 = vmatprep.mubr.f32.mxu0 0.0
  %9579 = vmatmul.mubr.f32.gmra.mrb[0].mxu0 %v9274
  %v9580 = vpop.f32.mrb[0].mxu0
  %v9581 = vadd.f32 0.0, %v9580
  %v9582 = vpop.f32.mrb[0].mxu0
  %9583 = vmatprep.mubr.f32.mxu0 0.0
  %9584 = vmatmul.mubr.f32.gmra.mrb[0].mxu0 %v9277
  %v9585 = vpop.f32.mrb[0].mxu0
  %v9586 = vadd.f32 0.0, %v9585
  %v9587 = vpop.f32.mrb[0].mxu0
  %9588 = vmatprep.mubr.f32.mxu0 0.0
  %9589 = vmatmul.mubr.f32.gmra.mrb[0].mxu0 %v9280
  %v9590 = vpop.f32.mrb[0].mxu0
  %v9591 = vadd.f32 0.0, %v9590
  %v9592 = vpop.f32.mrb[0].mxu0
  %9593 = vmatprep.mubr.f32.mxu0 0.0
  %9594 = vmatmul.mubr.f32.gmra.mrb[0].mxu0 %v9283
  %v9595 = vpop.f32.mrb[0].mxu0
  %v9596 = vadd.f32 0.0, %v9595
  %v9597 = vpop.f32.mrb[0].mxu0
  %9598 = vmatprep.mubr.f32.mxu0 0.0
  %9599 = vmatmul.mubr.f32.gmra.mrb[0].mxu0 %v9286
  %v9600 = vpop.f32.mrb[0].mxu0
  %v9601 = vadd.f32 0.0, %v9600
  %v9602 = vpop.f32.mrb[0].mxu0
  %9603 = vmatprep.mubr.f32.mxu0 0.0
  %9604 = vmatmul.mubr.f32.gmra.mrb[0].mxu0 %v9289
  %v9605 = vpop.f32.mrb[0].mxu0
  %v9606 = vadd.f32 0.0, %v9605
  %v9607 = vpop.f32.mrb[0].mxu0
  %9608 = vmatprep.mubr.f32.mxu0 0.0
  %9609 = vmatmul.mubr.f32.gmra.mrb[0].mxu0 %v9292
  %v9610 = vpop.f32.mrb[0].mxu0
  %v9611 = vadd.f32 0.0, %v9610
  %v9612 = vpop.f32.mrb[0].mxu0
  %9613 = vmatprep.mubr.f32.mxu0 0.0
  %9614 = vmatmul.mubr.f32.gmra.mrb[0].mxu0 %v9295
  %v9615 = vpop.f32.mrb[0].mxu0
  %v9616 = vadd.f32 0.0, %v9615
  %v9617 = vpop.f32.mrb[0].mxu0
  %9618 = vmatprep.mubr.f32.mxu0 0.0
  %9619 = vmatmul.mubr.f32.gmra.mrb[0].mxu0 %v9298
  %v9620 = vpop.f32.mrb[0].mxu0
  %v9621 = vadd.f32 0.0, %v9620
  %v9622 = vpop.f32.mrb[0].mxu0
  %9623 = vmatprep.mubr.f32.mxu0 0.0
  %9624 = vmatmul.mubr.f32.gmra.mrb[0].mxu0 %v9301
  %v9625 = vpop.f32.mrb[0].mxu0
  %v9626 = vadd.f32 0.0, %v9625
  %v9627 = vpop.f32.mrb[0].mxu0
  %9628 = vmatprep.mubr.f32.mxu0 0.0
  %9629 = vmatmul.mubr.f32.gmra.mrb[0].mxu0 %v9304
  %v9630 = vpop.f32.mrb[0].mxu0
  %v9631 = vadd.f32 0.0, %v9630
  %v9632 = vpop.f32.mrb[0].mxu0
  %9633 = vmatprep.mubr.f32.mxu0 0.0
  %9634 = vmatmul.mubr.f32.gmra.mrb[0].mxu0 %v9307
  %v9635 = vpop.f32.mrb[0].mxu0
  %v9636 = vadd.f32 0.0, %v9635
  %v9637 = vpop.f32.mrb[0].mxu0
  %9638 = vmatprep.mubr.f32.mxu0 0.0
  %9639 = vmatmul.mubr.f32.gmra.mrb[0].mxu0 %v9310
  %v9640 = vpop.f32.mrb[0].mxu0
  %v9641 = vadd.f32 0.0, %v9640
  %v9642 = vpop.f32.mrb[0].mxu0
  %9643 = vmatprep.mubr.f32.mxu0 0.0
  %9644 = vmatmul.mubr.f32.gmra.mrb[0].mxu0 %v9313
  %v9645 = vpop.f32.mrb[0].mxu0
  %v9646 = vadd.f32 0.0, %v9645
  %v9647 = vpop.f32.mrb[0].mxu0
  %9648 = vmatprep.mubr.f32.mxu0 0.0
  %9649 = vmatmul.mubr.f32.gmra.mrb[0].mxu0 %v9316
  %v9650 = vpop.f32.mrb[0].mxu0
  %v9651 = vadd.f32 0.0, %v9650
  %v9652 = vpop.f32.mrb[0].mxu0
  %9653 = vmatprep.mubr.f32.mxu0 0.0
  %9654 = vmatmul.mubr.f32.gmra.mrb[0].mxu0 %v9319
  %v9655 = vpop.f32.mrb[0].mxu0
  %v9656 = vadd.f32 0.0, %v9655
  %v9657 = vpop.f32.mrb[0].mxu0
  %9658 = vmatprep.mubr.f32.mxu0 0.0
  %9659 = vmatmul.mubr.f32.gmra.mrb[0].mxu0 %v9322
  %v9660 = vpop.f32.mrb[0].mxu0
  %v9661 = vadd.f32 0.0, %v9660
  %v9662 = vpop.f32.mrb[0].mxu0
  %9663 = vmatprep.mubr.f32.mxu0 0.0
  %9664 = vmatmul.mubr.f32.gmra.mrb[0].mxu0 %v9325
  %v9665 = vpop.f32.mrb[0].mxu0
  %v9666 = vadd.f32 0.0, %v9665
  %v9667 = vpop.f32.mrb[0].mxu0
  %9668 = vmatprep.mubr.f32.mxu0 0.0
  %9669 = vmatmul.mubr.f32.gmra.mrb[0].mxu0 %v9328
  %v9670 = vpop.f32.mrb[0].mxu0
  %v9671 = vadd.f32 0.0, %v9670
  %v9672 = vpop.f32.mrb[0].mxu0
  %9673 = vmatprep.mubr.f32.mxu0 0.0
  %9674 = vmatmul.mubr.f32.gmra.mrb[0].mxu0 %v9331
  %v9675 = vpop.f32.mrb[0].mxu0
  %v9676 = vadd.f32 0.0, %v9675
  %v9677 = vpop.f32.mrb[0].mxu0
  %9678 = vmatprep.mubr.f32.mxu0 0.0
  %9679 = vmatmul.mubr.f32.gmra.mrb[0].mxu0 %v9334
  %v9680 = vpop.f32.mrb[0].mxu0
  %v9681 = vadd.f32 0.0, %v9680
  %v9682 = vpop.f32.mrb[0].mxu0
  %9683 = vmatprep.mubr.f32.mxu0 0.0
  %9684 = vmatmul.mubr.f32.gmra.mrb[0].mxu0 %v9337
  %v9685 = vpop.f32.mrb[0].mxu0
  %v9686 = vadd.f32 0.0, %v9685
  %v9687 = vpop.f32.mrb[0].mxu0
  %9688 = vmatprep.mubr.f32.mxu0 0.0
  %9689 = vmatmul.mubr.f32.gmra.mrb[0].mxu0 %v9340
  %v9690 = vpop.f32.mrb[0].mxu0
  %v9691 = vadd.f32 0.0, %v9690
  %v9692 = vpop.f32.mrb[0].mxu0
  %9693 = vmatprep.mubr.f32.mxu0 0.0
  %9694 = vmatmul.mubr.f32.gmra.mrb[0].mxu0 %v9343
  %v9695 = vpop.f32.mrb[0].mxu0
  %v9696 = vadd.f32 0.0, %v9695
  %v9697 = vpop.f32.mrb[0].mxu0
  %9698 = vmatprep.mubr.f32.mxu0 0.0
  %9699 = vmatmul.mubr.f32.gmra.mrb[0].mxu0 %v9346
  %v9700 = vpop.f32.mrb[0].mxu0
  %v9701 = vadd.f32 0.0, %v9700
  %v9702 = vpop.f32.mrb[0].mxu0
  %9703 = vmatprep.mubr.f32.mxu0 0.0
  %9704 = vmatmul.mubr.f32.gmra.mrb[0].mxu0 %v9349
  %v9705 = vpop.f32.mrb[0].mxu0
  %v9706 = vadd.f32 0.0, %v9705
  %v9707 = vpop.f32.mrb[0].mxu0
  %9708 = vmatprep.mubr.f32.mxu0 0.0
  %9709 = vmatmul.mubr.f32.gmra.mrb[0].mxu0 %v9352
  %v9710 = vpop.f32.mrb[0].mxu0
  %v9711 = vadd.f32 0.0, %v9710
  %v9712 = vpop.f32.mrb[0].mxu0
  %9713 = vmatprep.mubr.f32.mxu0 0.0
  %9714 = vmatmul.mubr.f32.gmra.mrb[0].mxu0 %v9355
  %v9715 = vpop.f32.mrb[0].mxu0
  %v9716 = vadd.f32 0.0, %v9715
  %v9717 = vpop.f32.mrb[0].mxu0
  %9718 = vmatprep.mubr.f32.mxu0 0.0
  %9719 = vmatmul.mubr.f32.gmra.mrb[0].mxu0 %v9358
  %v9720 = vpop.f32.mrb[0].mxu0
  %v9721 = vadd.f32 0.0, %v9720
  %v9722 = vpop.f32.mrb[0].mxu0
  %9723 = vmatprep.mubr.f32.mxu0 0.0
  %9724 = vmatmul.mubr.f32.gmra.mrb[0].mxu0 %v9361
  %v9725 = vpop.f32.mrb[0].mxu0
  %v9726 = vadd.f32 0.0, %v9725
  %v9727 = vpop.f32.mrb[0].mxu0
  %9728 = vmatprep.mubr.f32.mxu0 0.0
  %9729 = vmatmul.mubr.f32.gmra.mrb[0].mxu0 %v9364
  %v9730 = vpop.f32.mrb[0].mxu0
  %v9731 = vadd.f32 0.0, %v9730
  %v9732 = vpop.f32.mrb[0].mxu0
  %9733 = vmatprep.mubr.f32.mxu0 0.0
  %9734 = vmatmul.mubr.f32.gmra.mrb[0].mxu0 %v9367
  %v9735 = vpop.f32.mrb[0].mxu0
  %v9736 = vadd.f32 0.0, %v9735
  %v9737 = vpop.f32.mrb[0].mxu0
  %9738 = vmatprep.mubr.f32.mxu0 0.0
  %9739 = vmatmul.mubr.f32.gmra.mrb[0].mxu0 %v9370
  %v9740 = vpop.f32.mrb[0].mxu0
  %v9741 = vadd.f32 0.0, %v9740
  %v9742 = vpop.f32.mrb[0].mxu0
  %9743 = vmatprep.mubr.f32.mxu0 0.0
  %9744 = vmatmul.mubr.f32.gmra.mrb[0].mxu0 %v9373
  %v9745 = vpop.f32.mrb[0].mxu0
  %v9746 = vadd.f32 0.0, %v9745
  %v9747 = vpop.f32.mrb[0].mxu0
  %9748 = vmatprep.mubr.f32.mxu0 0.0
  %9749 = vmatmul.mubr.f32.gmra.mrb[0].mxu0 %v9376
  %v9750 = vpop.f32.mrb[0].mxu0
  %v9751 = vadd.f32 0.0, %v9750
  %v9752 = vpop.f32.mrb[0].mxu0
  %9753 = vmatprep.mubr.f32.mxu0 0.0
  %9754 = vmatmul.mubr.f32.gmra.mrb[0].mxu0 %v9379
  %v9755 = vpop.f32.mrb[0].mxu0
  %v9756 = vadd.f32 0.0, %v9755
  %v9757 = vpop.f32.mrb[0].mxu0
  %9758 = vmatprep.mubr.f32.mxu0 0.0
  %9759 = vmatmul.mubr.f32.gmra.mrb[0].mxu0 %v9382
  %v9760 = vpop.f32.mrb[0].mxu0
  %v9761 = vadd.f32 0.0, %v9760
  %v9762 = vpop.f32.mrb[0].mxu0
  %9763 = vmatprep.mubr.f32.mxu0 0.0
  %9764 = vmatmul.mubr.f32.gmra.mrb[0].mxu0 %v9385
  %v9765 = vpop.f32.mrb[0].mxu0
  %v9766 = vadd.f32 0.0, %v9765
  %v9767 = vpop.f32.mrb[0].mxu0
  %9768 = vmatprep.mubr.f32.mxu0 0.0
  %9769 = vmatmul.mubr.f32.gmra.mrb[0].mxu0 %v9388
  %v9770 = vpop.f32.mrb[0].mxu0
  %v9771 = vadd.f32 0.0, %v9770
  %v9772 = vpop.f32.mrb[0].mxu0
  %9773 = vmatprep.mubr.f32.mxu0 0.0
  %9774 = vmatmul.mubr.f32.gmra.mrb[0].mxu0 %v9391
  %v9775 = vpop.f32.mrb[0].mxu0
  %v9776 = vadd.f32 0.0, %v9775
  %v9777 = vpop.f32.mrb[0].mxu0
  %9778 = vmatprep.mubr.f32.mxu0 0.0
  %9779 = vmatmul.mubr.f32.gmra.mrb[0].mxu0 %v9394
  %v9780 = vpop.f32.mrb[0].mxu0
  %v9781 = vadd.f32 0.0, %v9780
  %v9782 = vpop.f32.mrb[0].mxu0
  %9783 = vdwg.mxu0
  %v9784 = vadd.f32 %v9074, %v9466
  %v9785 = vadd.f32 %v9075, %v9471
  %v9786 = vadd.f32 %v9076, %v9476
  %v9787 = vadd.f32 %v9077, %v9481
  %v9788 = vadd.f32 %v9078, %v9486
  %v9789 = vadd.f32 %v9079, %v9491
  %v9790 = vadd.f32 %v9080, %v9496
  %v9791 = vadd.f32 %v9081, %v9501
  %v9792 = vadd.f32 %v9082, %v9506
  %v9793 = vadd.f32 %v9083, %v9511
  %v9794 = vadd.f32 %v9084, %v9516
  %v9795 = vadd.f32 %v9085, %v9521
  %v9796 = vadd.f32 %v9086, %v9526
  %v9797 = vadd.f32 %v9087, %v9531
  %v9798 = vadd.f32 %v9088, %v9536
  %v9799 = vadd.f32 %v9089, %v9541
  %v9800 = vadd.f32 %v9090, %v9546
  %v9801 = vadd.f32 %v9091, %v9551
  %v9802 = vadd.f32 %v9092, %v9556
  %v9803 = vadd.f32 %v9093, %v9561
  %v9804 = vadd.f32 %v9094, %v9566
  %v9805 = vadd.f32 %v9095, %v9571
  %v9806 = vadd.f32 %v9096, %v9576
  %v9807 = vadd.f32 %v9097, %v9581
  %v9808 = vadd.f32 %v9098, %v9586
  %v9809 = vadd.f32 %v9099, %v9591
  %v9810 = vadd.f32 %v9100, %v9596
  %v9811 = vadd.f32 %v9101, %v9601
  %v9812 = vadd.f32 %v9102, %v9606
  %v9813 = vadd.f32 %v9103, %v9611
  %v9814 = vadd.f32 %v9104, %v9616
  %v9815 = vadd.f32 %v9105, %v9621
  %v9816 = vadd.f32 %v9106, %v9626
  %v9817 = vadd.f32 %v9107, %v9631
  %v9818 = vadd.f32 %v9108, %v9636
  %v9819 = vadd.f32 %v9109, %v9641
  %v9820 = vadd.f32 %v9110, %v9646
  %v9821 = vadd.f32 %v9111, %v9651
  %v9822 = vadd.f32 %v9112, %v9656
  %v9823 = vadd.f32 %v9113, %v9661
  %v9824 = vadd.f32 %v9114, %v9666
  %v9825 = vadd.f32 %v9115, %v9671
  %v9826 = vadd.f32 %v9116, %v9676
  %v9827 = vadd.f32 %v9117, %v9681
  %v9828 = vadd.f32 %v9118, %v9686
  %v9829 = vadd.f32 %v9119, %v9691
  %v9830 = vadd.f32 %v9120, %v9696
  %v9831 = vadd.f32 %v9121, %v9701
  %v9832 = vadd.f32 %v9122, %v9706
  %v9833 = vadd.f32 %v9123, %v9711
  %v9834 = vadd.f32 %v9124, %v9716
  %v9835 = vadd.f32 %v9125, %v9721
  %v9836 = vadd.f32 %v9126, %v9726
  %v9837 = vadd.f32 %v9127, %v9731
  %v9838 = vadd.f32 %v9128, %v9736
  %v9839 = vadd.f32 %v9129, %v9741
  %v9840 = vadd.f32 %v9130, %v9746
  %v9841 = vadd.f32 %v9131, %v9751
  %v9842 = vadd.f32 %v9132, %v9756
  %v9843 = vadd.f32 %v9133, %v9761
  %v9844 = vadd.f32 %v9134, %v9766
  %v9845 = vadd.f32 %v9135, %v9771
  %v9846 = vadd.f32 %v9136, %v9776
  %v9847 = vadd.f32 %v9137, %v9781
  %v9848 = vld [vmem:[%s200 + $0x1] sm:$0xff]
  %v9849 = vld [vmem:[%s200 + $0x9] sm:$0xff]
  %v9850 = vld [vmem:[%s200 + $0x19] sm:$0xff]
  %v9851 = vld [vmem:[%s200 + $0x21] sm:$0xff]
  %v9852 = vld [vmem:[%s200 + $0x31] sm:$0xff]
  %v9853 = vld [vmem:[%s200 + $0x39] sm:$0xff]
  %v9854 = vld [vmem:[%s200 + $0x49] sm:$0xff]
  %v9855 = vld [vmem:[%s200 + $0x51] sm:$0xff]
  %v9856 = vld [vmem:[%s200 + $0x61] sm:$0xff]
  %v9857 = vld [vmem:[%s200 + $0x69] sm:$0xff]
  %v9858 = vld [vmem:[%s200 + $0x79] sm:$0xff]
  %v9859 = vld [vmem:[%s200 + $0x81] sm:$0xff]
  %v9860 = vld [vmem:[%s200 + $0x91] sm:$0xff]
  %v9861 = vld [vmem:[%s200 + $0x99] sm:$0xff]
  %v9862 = vld [vmem:[%s200 + $0xa9] sm:$0xff]
  %v9863 = vld [vmem:[%s200 + $0xb1] sm:$0xff]
  %v9864 = vld [vmem:[%s200 + $0xc1] sm:$0xff]
  %v9865 = vld [vmem:[%s200 + $0xc9] sm:$0xff]
  %v9866 = vld [vmem:[%s200 + $0xd9] sm:$0xff]
  %v9867 = vld [vmem:[%s200 + $0xe1] sm:$0xff]
  %v9868 = vld [vmem:[%s200 + $0xf1] sm:$0xff]
  %v9869 = vld [vmem:[%s200 + $0xf9] sm:$0xff]
  %v9870 = vld [vmem:[%s200 + $0x109] sm:$0xff]
  %v9871 = vld [vmem:[%s200 + $0x111] sm:$0xff]
  %v9872 = vld [vmem:[%s200 + $0x121] sm:$0xff]
  %v9873 = vld [vmem:[%s200 + $0x129] sm:$0xff]
  %v9874 = vld [vmem:[%s200 + $0x139] sm:$0xff]
  %v9875 = vld [vmem:[%s200 + $0x141] sm:$0xff]
  %v9876 = vld [vmem:[%s200 + $0x151] sm:$0xff]
  %v9877 = vld [vmem:[%s200 + $0x159] sm:$0xff]
  %v9878 = vld [vmem:[%s200 + $0x169] sm:$0xff]
  %v9879 = vld [vmem:[%s200 + $0x171] sm:$0xff]
  %v9880 = vld [vmem:[%s200 + $0x1b1] sm:$0xff]
  %v9881 = vld [vmem:[%s200 + $0x1b9] sm:$0xff]
  %v9882 = vld [vmem:[%s200 + $0x1c9] sm:$0xff]
  %v9883 = vld [vmem:[%s200 + $0x1d1] sm:$0xff]
  %v9884 = vld [vmem:[%s200 + $0x1e1] sm:$0xff]
  %v9885 = vld [vmem:[%s200 + $0x1e9] sm:$0xff]
  %v9886 = vld [vmem:[%s200 + $0x1f9] sm:$0xff]
  %v9887 = vld [vmem:[%s200 + $0x201] sm:$0xff]
  %v9888 = vld [vmem:[%s200 + $0x211] sm:$0xff]
  %v9889 = vld [vmem:[%s200 + $0x219] sm:$0xff]
  %v9890 = vld [vmem:[%s200 + $0x229] sm:$0xff]
  %v9891 = vld [vmem:[%s200 + $0x231] sm:$0xff]
  %v9892 = vld [vmem:[%s200 + $0x241] sm:$0xff]
  %v9893 = vld [vmem:[%s200 + $0x249] sm:$0xff]
  %v9894 = vld [vmem:[%s200 + $0x259] sm:$0xff]
  %v9895 = vld [vmem:[%s200 + $0x261] sm:$0xff]
  %v9896 = vld [vmem:[%s200 + $0x271] sm:$0xff]
  %v9897 = vld [vmem:[%s200 + $0x279] sm:$0xff]
  %v9898 = vld [vmem:[%s200 + $0x289] sm:$0xff]
  %v9899 = vld [vmem:[%s200 + $0x291] sm:$0xff]
  %v9900 = vld [vmem:[%s200 + $0x2a1] sm:$0xff]
  %v9901 = vld [vmem:[%s200 + $0x2a9] sm:$0xff]
  %v9902 = vld [vmem:[%s200 + $0x2b9] sm:$0xff]
  %v9903 = vld [vmem:[%s200 + $0x2c1] sm:$0xff]
  %v9904 = vld [vmem:[%s200 + $0x2d1] sm:$0xff]
  %v9905 = vld [vmem:[%s200 + $0x2d9] sm:$0xff]
  %v9906 = vld [vmem:[%s200 + $0x2e9] sm:$0xff]
  %v9907 = vld [vmem:[%s200 + $0x2f1] sm:$0xff]
  %v9908 = vld [vmem:[%s200 + $0x301] sm:$0xff]
  %v9909 = vld [vmem:[%s200 + $0x309] sm:$0xff]
  %v9910 = vld [vmem:[%s200 + $0x319] sm:$0xff]
  %v9911 = vld [vmem:[%s200 + $0x321] sm:$0xff]
  %s9912 = scalar_lea.vmem %s4, 16
  %v9913 = vld [vmem:[%s9912] sm:$0xf]
  %v9915 = vsel %vm26, %v9848, 0
  %v9918 = vsel %vm26, %v9849, 0
  %v9921 = vsel %vm26, %v9850, 0
  %v9924 = vsel %vm26, %v9851, 0
  %v9927 = vsel %vm26, %v9852, 0
  %v9930 = vsel %vm26, %v9853, 0
  %v9933 = vsel %vm26, %v9854, 0
  %v9936 = vsel %vm26, %v9855, 0
  %v9939 = vsel %vm26, %v9856, 0
  %v9942 = vsel %vm26, %v9857, 0
  %v9945 = vsel %vm26, %v9858, 0
  %v9948 = vsel %vm26, %v9859, 0
  %v9951 = vsel %vm26, %v9860, 0
  %v9954 = vsel %vm26, %v9861, 0
  %v9957 = vsel %vm26, %v9862, 0
  %v9960 = vsel %vm26, %v9863, 0
  %v9963 = vsel %vm26, %v9864, 0
  %v9966 = vsel %vm26, %v9865, 0
  %v9969 = vsel %vm26, %v9866, 0
  %v9972 = vsel %vm26, %v9867, 0
  %v9975 = vsel %vm26, %v9868, 0
  %v9978 = vsel %vm26, %v9869, 0
  %v9981 = vsel %vm26, %v9870, 0
  %v9984 = vsel %vm26, %v9871, 0
  %v9987 = vsel %vm26, %v9872, 0
  %v9990 = vsel %vm26, %v9873, 0
  %v9993 = vsel %vm26, %v9874, 0
  %v9996 = vsel %vm26, %v9875, 0
  %v9999 = vsel %vm26, %v9876, 0
  %v10002 = vsel %vm26, %v9877, 0
  %v10005 = vsel %vm26, %v9878, 0
  %v10008 = vsel %vm26, %v9879, 0
  %v10011 = vsel %vm26, %v9880, 0
  %v10014 = vsel %vm26, %v9881, 0
  %v10017 = vsel %vm26, %v9882, 0
  %v10020 = vsel %vm26, %v9883, 0
  %v10023 = vsel %vm26, %v9884, 0
  %v10026 = vsel %vm26, %v9885, 0
  %v10029 = vsel %vm26, %v9886, 0
  %v10032 = vsel %vm26, %v9887, 0
  %v10035 = vsel %vm26, %v9888, 0
  %v10038 = vsel %vm26, %v9889, 0
  %v10041 = vsel %vm26, %v9890, 0
  %v10044 = vsel %vm26, %v9891, 0
  %v10047 = vsel %vm26, %v9892, 0
  %v10050 = vsel %vm26, %v9893, 0
  %v10053 = vsel %vm26, %v9894, 0
  %v10056 = vsel %vm26, %v9895, 0
  %v10059 = vsel %vm26, %v9896, 0
  %v10062 = vsel %vm26, %v9897, 0
  %v10065 = vsel %vm26, %v9898, 0
  %v10068 = vsel %vm26, %v9899, 0
  %v10071 = vsel %vm26, %v9900, 0
  %v10074 = vsel %vm26, %v9901, 0
  %v10077 = vsel %vm26, %v9902, 0
  %v10080 = vsel %vm26, %v9903, 0
  %v10083 = vsel %vm26, %v9904, 0
  %v10086 = vsel %vm26, %v9905, 0
  %v10089 = vsel %vm26, %v9906, 0
  %v10092 = vsel %vm26, %v9907, 0
  %v10095 = vsel %vm26, %v9908, 0
  %v10098 = vsel %vm26, %v9909, 0
  %v10101 = vsel %vm26, %v9910, 0
  %v10104 = vsel %vm26, %v9911, 0
  %v10107 = vsel %vm588, %v9913, 0
  %10109 = vmatprep.subr.mxu0 0.0
  %10110 = vmatpush1.msra.mxu0 %v10107
  %10111 = vmatprep.subr.mxu0 0.0
  %10112 = vmatpush1.msra.mxu0 0.0
  %10113 = vmatprep.subr.mxu0 0.0
  %10114 = vmatpush1.msra.mxu0 0.0
  %10115 = vmatprep.subr.mxu0 0.0
  %10116 = vmatpush1.msra.mxu0 0.0
  %10117 = vmatprep.subr.mxu0 0.0
  %10118 = vmatpush1.msra.mxu0 0.0
  %10119 = vmatprep.subr.mxu0 0.0
  %10120 = vmatpush1.msra.mxu0 0.0
  %10121 = vmatprep.subr.mxu0 0.0
  %10122 = vmatpush1.msra.mxu0 0.0
  %10123 = vmatprep.subr.mxu0 0.0
  %10124 = vmatpush1.msra.mxu0 0.0
  %10125 = vmatprep.subr.mxu0 0.0
  %10126 = vmatpush1.msra.mxu0 0.0
  %10127 = vmatprep.subr.mxu0 0.0
  %10128 = vmatpush1.msra.mxu0 0.0
  %10129 = vmatprep.subr.mxu0 0.0
  %10130 = vmatpush1.msra.mxu0 0.0
  %10131 = vmatprep.subr.mxu0 0.0
  %10132 = vmatpush1.msra.mxu0 0.0
  %10133 = vmatprep.subr.mxu0 0.0
  %10134 = vmatpush1.msra.mxu0 0.0
  %10135 = vmatprep.subr.mxu0 0.0
  %10136 = vmatpush1.msra.mxu0 0.0
  %10137 = vmatprep.subr.mxu0 0.0
  %10138 = vmatpush1.msra.mxu0 0.0
  %10139 = vmatprep.subr.mxu0 0.0
  %10140 = vmatpush1.msra.mxu0 0.0
  %10141 = vmatprep.subr.mxu0 0.0
  %10142 = vmatpush1.msra.mxu0 0.0
  %10143 = vmatprep.subr.mxu0 0.0
  %10144 = vmatpush1.msra.mxu0 0.0
  %10145 = vmatprep.subr.mxu0 0.0
  %10146 = vmatpush1.msra.mxu0 0.0
  %10147 = vmatprep.subr.mxu0 0.0
  %10148 = vmatpush1.msra.mxu0 0.0
  %10149 = vmatprep.subr.mxu0 0.0
  %10150 = vmatpush1.msra.mxu0 0.0
  %10151 = vmatprep.subr.mxu0 0.0
  %10152 = vmatpush1.msra.mxu0 0.0
  %10153 = vmatprep.subr.mxu0 0.0
  %10154 = vmatpush1.msra.mxu0 0.0
  %10155 = vmatprep.subr.mxu0 0.0
  %10156 = vmatpush1.msra.mxu0 0.0
  %10157 = vmatprep.subr.mxu0 0.0
  %10158 = vmatpush1.msra.mxu0 0.0
  %10159 = vmatprep.subr.mxu0 0.0
  %10160 = vmatpush1.msra.mxu0 0.0
  %10161 = vmatprep.subr.mxu0 0.0
  %10162 = vmatpush1.msra.mxu0 0.0
  %10163 = vmatprep.subr.mxu0 0.0
  %10164 = vmatpush1.msra.mxu0 0.0
  %10165 = vmatprep.subr.mxu0 0.0
  %10166 = vmatpush1.msra.mxu0 0.0
  %10167 = vmatprep.subr.mxu0 0.0
  %10168 = vmatpush1.msra.mxu0 0.0
  %10169 = vmatprep.subr.mxu0 0.0
  %10170 = vmatpush1.msra.mxu0 0.0
  %10171 = vmatprep.subr.mxu0 0.0
  %10172 = vmatpush1.msra.mxu0 0.0
  %10173 = vmatprep.mubr.f32.mxu0 0.0
  %10174 = vmatmul.mubr.f32.gmra.mrb[0].mxu0 %v9915
  %v10175 = vpop.f32.mrb[0].mxu0
  %v10176 = vadd.f32 0.0, %v10175
  %v10177 = vpop.f32.mrb[0].mxu0
  %10178 = vmatprep.mubr.f32.mxu0 0.0
  %10179 = vmatmul.mubr.f32.gmra.mrb[0].mxu0 %v9918
  %v10180 = vpop.f32.mrb[0].mxu0
  %v10181 = vadd.f32 0.0, %v10180
  %v10182 = vpop.f32.mrb[0].mxu0
  %10183 = vmatprep.mubr.f32.mxu0 0.0
  %10184 = vmatmul.mubr.f32.gmra.mrb[0].mxu0 %v9921
  %v10185 = vpop.f32.mrb[0].mxu0
  %v10186 = vadd.f32 0.0, %v10185
  %v10187 = vpop.f32.mrb[0].mxu0
  %10188 = vmatprep.mubr.f32.mxu0 0.0
  %10189 = vmatmul.mubr.f32.gmra.mrb[0].mxu0 %v9924
  %v10190 = vpop.f32.mrb[0].mxu0
  %v10191 = vadd.f32 0.0, %v10190
  %v10192 = vpop.f32.mrb[0].mxu0
  %10193 = vmatprep.mubr.f32.mxu0 0.0
  %10194 = vmatmul.mubr.f32.gmra.mrb[0].mxu0 %v9927
  %v10195 = vpop.f32.mrb[0].mxu0
  %v10196 = vadd.f32 0.0, %v10195
  %v10197 = vpop.f32.mrb[0].mxu0
  %10198 = vmatprep.mubr.f32.mxu0 0.0
  %10199 = vmatmul.mubr.f32.gmra.mrb[0].mxu0 %v9930
  %v10200 = vpop.f32.mrb[0].mxu0
  %v10201 = vadd.f32 0.0, %v10200
  %v10202 = vpop.f32.mrb[0].mxu0
  %10203 = vmatprep.mubr.f32.mxu0 0.0
  %10204 = vmatmul.mubr.f32.gmra.mrb[0].mxu0 %v9933
  %v10205 = vpop.f32.mrb[0].mxu0
  %v10206 = vadd.f32 0.0, %v10205
  %v10207 = vpop.f32.mrb[0].mxu0
  %10208 = vmatprep.mubr.f32.mxu0 0.0
  %10209 = vmatmul.mubr.f32.gmra.mrb[0].mxu0 %v9936
  %v10210 = vpop.f32.mrb[0].mxu0
  %v10211 = vadd.f32 0.0, %v10210
  %v10212 = vpop.f32.mrb[0].mxu0
  %10213 = vmatprep.mubr.f32.mxu0 0.0
  %10214 = vmatmul.mubr.f32.gmra.mrb[0].mxu0 %v9939
  %v10215 = vpop.f32.mrb[0].mxu0
  %v10216 = vadd.f32 0.0, %v10215
  %v10217 = vpop.f32.mrb[0].mxu0
  %10218 = vmatprep.mubr.f32.mxu0 0.0
  %10219 = vmatmul.mubr.f32.gmra.mrb[0].mxu0 %v9942
  %v10220 = vpop.f32.mrb[0].mxu0
  %v10221 = vadd.f32 0.0, %v10220
  %v10222 = vpop.f32.mrb[0].mxu0
  %10223 = vmatprep.mubr.f32.mxu0 0.0
  %10224 = vmatmul.mubr.f32.gmra.mrb[0].mxu0 %v9945
  %v10225 = vpop.f32.mrb[0].mxu0
  %v10226 = vadd.f32 0.0, %v10225
  %v10227 = vpop.f32.mrb[0].mxu0
  %10228 = vmatprep.mubr.f32.mxu0 0.0
  %10229 = vmatmul.mubr.f32.gmra.mrb[0].mxu0 %v9948
  %v10230 = vpop.f32.mrb[0].mxu0
  %v10231 = vadd.f32 0.0, %v10230
  %v10232 = vpop.f32.mrb[0].mxu0
  %10233 = vmatprep.mubr.f32.mxu0 0.0
  %10234 = vmatmul.mubr.f32.gmra.mrb[0].mxu0 %v9951
  %v10235 = vpop.f32.mrb[0].mxu0
  %v10236 = vadd.f32 0.0, %v10235
  %v10237 = vpop.f32.mrb[0].mxu0
  %10238 = vmatprep.mubr.f32.mxu0 0.0
  %10239 = vmatmul.mubr.f32.gmra.mrb[0].mxu0 %v9954
  %v10240 = vpop.f32.mrb[0].mxu0
  %v10241 = vadd.f32 0.0, %v10240
  %v10242 = vpop.f32.mrb[0].mxu0
  %10243 = vmatprep.mubr.f32.mxu0 0.0
  %10244 = vmatmul.mubr.f32.gmra.mrb[0].mxu0 %v9957
  %v10245 = vpop.f32.mrb[0].mxu0
  %v10246 = vadd.f32 0.0, %v10245
  %v10247 = vpop.f32.mrb[0].mxu0
  %10248 = vmatprep.mubr.f32.mxu0 0.0
  %10249 = vmatmul.mubr.f32.gmra.mrb[0].mxu0 %v9960
  %v10250 = vpop.f32.mrb[0].mxu0
  %v10251 = vadd.f32 0.0, %v10250
  %v10252 = vpop.f32.mrb[0].mxu0
  %10253 = vmatprep.mubr.f32.mxu0 0.0
  %10254 = vmatmul.mubr.f32.gmra.mrb[0].mxu0 %v9963
  %v10255 = vpop.f32.mrb[0].mxu0
  %v10256 = vadd.f32 0.0, %v10255
  %v10257 = vpop.f32.mrb[0].mxu0
  %10258 = vmatprep.mubr.f32.mxu0 0.0
  %10259 = vmatmul.mubr.f32.gmra.mrb[0].mxu0 %v9966
  %v10260 = vpop.f32.mrb[0].mxu0
  %v10261 = vadd.f32 0.0, %v10260
  %v10262 = vpop.f32.mrb[0].mxu0
  %10263 = vmatprep.mubr.f32.mxu0 0.0
  %10264 = vmatmul.mubr.f32.gmra.mrb[0].mxu0 %v9969
  %v10265 = vpop.f32.mrb[0].mxu0
  %v10266 = vadd.f32 0.0, %v10265
  %v10267 = vpop.f32.mrb[0].mxu0
  %10268 = vmatprep.mubr.f32.mxu0 0.0
  %10269 = vmatmul.mubr.f32.gmra.mrb[0].mxu0 %v9972
  %v10270 = vpop.f32.mrb[0].mxu0
  %v10271 = vadd.f32 0.0, %v10270
  %v10272 = vpop.f32.mrb[0].mxu0
  %10273 = vmatprep.mubr.f32.mxu0 0.0
  %10274 = vmatmul.mubr.f32.gmra.mrb[0].mxu0 %v9975
  %v10275 = vpop.f32.mrb[0].mxu0
  %v10276 = vadd.f32 0.0, %v10275
  %v10277 = vpop.f32.mrb[0].mxu0
  %10278 = vmatprep.mubr.f32.mxu0 0.0
  %10279 = vmatmul.mubr.f32.gmra.mrb[0].mxu0 %v9978
  %v10280 = vpop.f32.mrb[0].mxu0
  %v10281 = vadd.f32 0.0, %v10280
  %v10282 = vpop.f32.mrb[0].mxu0
  %10283 = vmatprep.mubr.f32.mxu0 0.0
  %10284 = vmatmul.mubr.f32.gmra.mrb[0].mxu0 %v9981
  %v10285 = vpop.f32.mrb[0].mxu0
  %v10286 = vadd.f32 0.0, %v10285
  %v10287 = vpop.f32.mrb[0].mxu0
  %10288 = vmatprep.mubr.f32.mxu0 0.0
  %10289 = vmatmul.mubr.f32.gmra.mrb[0].mxu0 %v9984
  %v10290 = vpop.f32.mrb[0].mxu0
  %v10291 = vadd.f32 0.0, %v10290
  %v10292 = vpop.f32.mrb[0].mxu0
  %10293 = vmatprep.mubr.f32.mxu0 0.0
  %10294 = vmatmul.mubr.f32.gmra.mrb[0].mxu0 %v9987
  %v10295 = vpop.f32.mrb[0].mxu0
  %v10296 = vadd.f32 0.0, %v10295
  %v10297 = vpop.f32.mrb[0].mxu0
  %10298 = vmatprep.mubr.f32.mxu0 0.0
  %10299 = vmatmul.mubr.f32.gmra.mrb[0].mxu0 %v9990
  %v10300 = vpop.f32.mrb[0].mxu0
  %v10301 = vadd.f32 0.0, %v10300
  %v10302 = vpop.f32.mrb[0].mxu0
  %10303 = vmatprep.mubr.f32.mxu0 0.0
  %10304 = vmatmul.mubr.f32.gmra.mrb[0].mxu0 %v9993
  %v10305 = vpop.f32.mrb[0].mxu0
  %v10306 = vadd.f32 0.0, %v10305
  %v10307 = vpop.f32.mrb[0].mxu0
  %10308 = vmatprep.mubr.f32.mxu0 0.0
  %10309 = vmatmul.mubr.f32.gmra.mrb[0].mxu0 %v9996
  %v10310 = vpop.f32.mrb[0].mxu0
  %v10311 = vadd.f32 0.0, %v10310
  %v10312 = vpop.f32.mrb[0].mxu0
  %10313 = vmatprep.mubr.f32.mxu0 0.0
  %10314 = vmatmul.mubr.f32.gmra.mrb[0].mxu0 %v9999
  %v10315 = vpop.f32.mrb[0].mxu0
  %v10316 = vadd.f32 0.0, %v10315
  %v10317 = vpop.f32.mrb[0].mxu0
  %10318 = vmatprep.mubr.f32.mxu0 0.0
  %10319 = vmatmul.mubr.f32.gmra.mrb[0].mxu0 %v10002
  %v10320 = vpop.f32.mrb[0].mxu0
  %v10321 = vadd.f32 0.0, %v10320
  %v10322 = vpop.f32.mrb[0].mxu0
  %10323 = vmatprep.mubr.f32.mxu0 0.0
  %10324 = vmatmul.mubr.f32.gmra.mrb[0].mxu0 %v10005
  %v10325 = vpop.f32.mrb[0].mxu0
  %v10326 = vadd.f32 0.0, %v10325
  %v10327 = vpop.f32.mrb[0].mxu0
  %10328 = vmatprep.mubr.f32.mxu0 0.0
  %10329 = vmatmul.mubr.f32.gmra.mrb[0].mxu0 %v10008
  %v10330 = vpop.f32.mrb[0].mxu0
  %v10331 = vadd.f32 0.0, %v10330
  %v10332 = vpop.f32.mrb[0].mxu0
  %10333 = vmatprep.mubr.f32.mxu0 0.0
  %10334 = vmatmul.mubr.f32.gmra.mrb[0].mxu0 %v10011
  %v10335 = vpop.f32.mrb[0].mxu0
  %v10336 = vadd.f32 0.0, %v10335
  %v10337 = vpop.f32.mrb[0].mxu0
  %10338 = vmatprep.mubr.f32.mxu0 0.0
  %10339 = vmatmul.mubr.f32.gmra.mrb[0].mxu0 %v10014
  %v10340 = vpop.f32.mrb[0].mxu0
  %v10341 = vadd.f32 0.0, %v10340
  %v10342 = vpop.f32.mrb[0].mxu0
  %10343 = vmatprep.mubr.f32.mxu0 0.0
  %10344 = vmatmul.mubr.f32.gmra.mrb[0].mxu0 %v10017
  %v10345 = vpop.f32.mrb[0].mxu0
  %v10346 = vadd.f32 0.0, %v10345
  %v10347 = vpop.f32.mrb[0].mxu0
  %10348 = vmatprep.mubr.f32.mxu0 0.0
  %10349 = vmatmul.mubr.f32.gmra.mrb[0].mxu0 %v10020
  %v10350 = vpop.f32.mrb[0].mxu0
  %v10351 = vadd.f32 0.0, %v10350
  %v10352 = vpop.f32.mrb[0].mxu0
  %10353 = vmatprep.mubr.f32.mxu0 0.0
  %10354 = vmatmul.mubr.f32.gmra.mrb[0].mxu0 %v10023
  %v10355 = vpop.f32.mrb[0].mxu0
  %v10356 = vadd.f32 0.0, %v10355
  %v10357 = vpop.f32.mrb[0].mxu0
  %10358 = vmatprep.mubr.f32.mxu0 0.0
  %10359 = vmatmul.mubr.f32.gmra.mrb[0].mxu0 %v10026
  %v10360 = vpop.f32.mrb[0].mxu0
  %v10361 = vadd.f32 0.0, %v10360
  %v10362 = vpop.f32.mrb[0].mxu0
  %10363 = vmatprep.mubr.f32.mxu0 0.0
  %10364 = vmatmul.mubr.f32.gmra.mrb[0].mxu0 %v10029
  %v10365 = vpop.f32.mrb[0].mxu0
  %v10366 = vadd.f32 0.0, %v10365
  %v10367 = vpop.f32.mrb[0].mxu0
  %10368 = vmatprep.mubr.f32.mxu0 0.0
  %10369 = vmatmul.mubr.f32.gmra.mrb[0].mxu0 %v10032
  %v10370 = vpop.f32.mrb[0].mxu0
  %v10371 = vadd.f32 0.0, %v10370
  %v10372 = vpop.f32.mrb[0].mxu0
  %10373 = vmatprep.mubr.f32.mxu0 0.0
  %10374 = vmatmul.mubr.f32.gmra.mrb[0].mxu0 %v10035
  %v10375 = vpop.f32.mrb[0].mxu0
  %v10376 = vadd.f32 0.0, %v10375
  %v10377 = vpop.f32.mrb[0].mxu0
  %10378 = vmatprep.mubr.f32.mxu0 0.0
  %10379 = vmatmul.mubr.f32.gmra.mrb[0].mxu0 %v10038
  %v10380 = vpop.f32.mrb[0].mxu0
  %v10381 = vadd.f32 0.0, %v10380
  %v10382 = vpop.f32.mrb[0].mxu0
  %10383 = vmatprep.mubr.f32.mxu0 0.0
  %10384 = vmatmul.mubr.f32.gmra.mrb[0].mxu0 %v10041
  %v10385 = vpop.f32.mrb[0].mxu0
  %v10386 = vadd.f32 0.0, %v10385
  %v10387 = vpop.f32.mrb[0].mxu0
  %10388 = vmatprep.mubr.f32.mxu0 0.0
  %10389 = vmatmul.mubr.f32.gmra.mrb[0].mxu0 %v10044
  %v10390 = vpop.f32.mrb[0].mxu0
  %v10391 = vadd.f32 0.0, %v10390
  %v10392 = vpop.f32.mrb[0].mxu0
  %10393 = vmatprep.mubr.f32.mxu0 0.0
  %10394 = vmatmul.mubr.f32.gmra.mrb[0].mxu0 %v10047
  %v10395 = vpop.f32.mrb[0].mxu0
  %v10396 = vadd.f32 0.0, %v10395
  %v10397 = vpop.f32.mrb[0].mxu0
  %10398 = vmatprep.mubr.f32.mxu0 0.0
  %10399 = vmatmul.mubr.f32.gmra.mrb[0].mxu0 %v10050
  %v10400 = vpop.f32.mrb[0].mxu0
  %v10401 = vadd.f32 0.0, %v10400
  %v10402 = vpop.f32.mrb[0].mxu0
  %10403 = vmatprep.mubr.f32.mxu0 0.0
  %10404 = vmatmul.mubr.f32.gmra.mrb[0].mxu0 %v10053
  %v10405 = vpop.f32.mrb[0].mxu0
  %v10406 = vadd.f32 0.0, %v10405
  %v10407 = vpop.f32.mrb[0].mxu0
  %10408 = vmatprep.mubr.f32.mxu0 0.0
  %10409 = vmatmul.mubr.f32.gmra.mrb[0].mxu0 %v10056
  %v10410 = vpop.f32.mrb[0].mxu0
  %v10411 = vadd.f32 0.0, %v10410
  %v10412 = vpop.f32.mrb[0].mxu0
  %10413 = vmatprep.mubr.f32.mxu0 0.0
  %10414 = vmatmul.mubr.f32.gmra.mrb[0].mxu0 %v10059
  %v10415 = vpop.f32.mrb[0].mxu0
  %v10416 = vadd.f32 0.0, %v10415
  %v10417 = vpop.f32.mrb[0].mxu0
  %10418 = vmatprep.mubr.f32.mxu0 0.0
  %10419 = vmatmul.mubr.f32.gmra.mrb[0].mxu0 %v10062
  %v10420 = vpop.f32.mrb[0].mxu0
  %v10421 = vadd.f32 0.0, %v10420
  %v10422 = vpop.f32.mrb[0].mxu0
  %10423 = vmatprep.mubr.f32.mxu0 0.0
  %10424 = vmatmul.mubr.f32.gmra.mrb[0].mxu0 %v10065
  %v10425 = vpop.f32.mrb[0].mxu0
  %v10426 = vadd.f32 0.0, %v10425
  %v10427 = vpop.f32.mrb[0].mxu0
  %10428 = vmatprep.mubr.f32.mxu0 0.0
  %10429 = vmatmul.mubr.f32.gmra.mrb[0].mxu0 %v10068
  %v10430 = vpop.f32.mrb[0].mxu0
  %v10431 = vadd.f32 0.0, %v10430
  %v10432 = vpop.f32.mrb[0].mxu0
  %10433 = vmatprep.mubr.f32.mxu0 0.0
  %10434 = vmatmul.mubr.f32.gmra.mrb[0].mxu0 %v10071
  %v10435 = vpop.f32.mrb[0].mxu0
  %v10436 = vadd.f32 0.0, %v10435
  %v10437 = vpop.f32.mrb[0].mxu0
  %10438 = vmatprep.mubr.f32.mxu0 0.0
  %10439 = vmatmul.mubr.f32.gmra.mrb[0].mxu0 %v10074
  %v10440 = vpop.f32.mrb[0].mxu0
  %v10441 = vadd.f32 0.0, %v10440
  %v10442 = vpop.f32.mrb[0].mxu0
  %10443 = vmatprep.mubr.f32.mxu0 0.0
  %10444 = vmatmul.mubr.f32.gmra.mrb[0].mxu0 %v10077
  %v10445 = vpop.f32.mrb[0].mxu0
  %v10446 = vadd.f32 0.0, %v10445
  %v10447 = vpop.f32.mrb[0].mxu0
  %10448 = vmatprep.mubr.f32.mxu0 0.0
  %10449 = vmatmul.mubr.f32.gmra.mrb[0].mxu0 %v10080
  %v10450 = vpop.f32.mrb[0].mxu0
  %v10451 = vadd.f32 0.0, %v10450
  %v10452 = vpop.f32.mrb[0].mxu0
  %10453 = vmatprep.mubr.f32.mxu0 0.0
  %10454 = vmatmul.mubr.f32.gmra.mrb[0].mxu0 %v10083
  %v10455 = vpop.f32.mrb[0].mxu0
  %v10456 = vadd.f32 0.0, %v10455
  %v10457 = vpop.f32.mrb[0].mxu0
  %10458 = vmatprep.mubr.f32.mxu0 0.0
  %10459 = vmatmul.mubr.f32.gmra.mrb[0].mxu0 %v10086
  %v10460 = vpop.f32.mrb[0].mxu0
  %v10461 = vadd.f32 0.0, %v10460
  %v10462 = vpop.f32.mrb[0].mxu0
  %10463 = vmatprep.mubr.f32.mxu0 0.0
  %10464 = vmatmul.mubr.f32.gmra.mrb[0].mxu0 %v10089
  %v10465 = vpop.f32.mrb[0].mxu0
  %v10466 = vadd.f32 0.0, %v10465
  %v10467 = vpop.f32.mrb[0].mxu0
  %10468 = vmatprep.mubr.f32.mxu0 0.0
  %10469 = vmatmul.mubr.f32.gmra.mrb[0].mxu0 %v10092
  %v10470 = vpop.f32.mrb[0].mxu0
  %v10471 = vadd.f32 0.0, %v10470
  %v10472 = vpop.f32.mrb[0].mxu0
  %10473 = vmatprep.mubr.f32.mxu0 0.0
  %10474 = vmatmul.mubr.f32.gmra.mrb[0].mxu0 %v10095
  %v10475 = vpop.f32.mrb[0].mxu0
  %v10476 = vadd.f32 0.0, %v10475
  %v10477 = vpop.f32.mrb[0].mxu0
  %10478 = vmatprep.mubr.f32.mxu0 0.0
  %10479 = vmatmul.mubr.f32.gmra.mrb[0].mxu0 %v10098
  %v10480 = vpop.f32.mrb[0].mxu0
  %v10481 = vadd.f32 0.0, %v10480
  %v10482 = vpop.f32.mrb[0].mxu0
  %10483 = vmatprep.mubr.f32.mxu0 0.0
  %10484 = vmatmul.mubr.f32.gmra.mrb[0].mxu0 %v10101
  %v10485 = vpop.f32.mrb[0].mxu0
  %v10486 = vadd.f32 0.0, %v10485
  %v10487 = vpop.f32.mrb[0].mxu0
  %10488 = vmatprep.mubr.f32.mxu0 0.0
  %10489 = vmatmul.mubr.f32.gmra.mrb[0].mxu0 %v10104
  %v10490 = vpop.f32.mrb[0].mxu0
  %v10491 = vadd.f32 0.0, %v10490
  %v10492 = vpop.f32.mrb[0].mxu0
  %10493 = vdwg.mxu0
  %v10494 = vadd.f32 %v9784, %v10176
  %v10495 = vadd.f32 %v9785, %v10181
  %v10496 = vadd.f32 %v9786, %v10186
  %v10497 = vadd.f32 %v9787, %v10191
  %v10498 = vadd.f32 %v9788, %v10196
  %v10499 = vadd.f32 %v9789, %v10201
  %v10500 = vadd.f32 %v9790, %v10206
  %v10501 = vadd.f32 %v9791, %v10211
  %v10502 = vadd.f32 %v9792, %v10216
  %v10503 = vadd.f32 %v9793, %v10221
  %v10504 = vadd.f32 %v9794, %v10226
  %v10505 = vadd.f32 %v9795, %v10231
  %v10506 = vadd.f32 %v9796, %v10236
  %v10507 = vadd.f32 %v9797, %v10241
  %v10508 = vadd.f32 %v9798, %v10246
  %v10509 = vadd.f32 %v9799, %v10251
  %v10510 = vadd.f32 %v9800, %v10256
  %v10511 = vadd.f32 %v9801, %v10261
  %v10512 = vadd.f32 %v9802, %v10266
  %v10513 = vadd.f32 %v9803, %v10271
  %v10514 = vadd.f32 %v9804, %v10276
  %v10515 = vadd.f32 %v9805, %v10281
  %v10516 = vadd.f32 %v9806, %v10286
  %v10517 = vadd.f32 %v9807, %v10291
  %v10518 = vadd.f32 %v9808, %v10296
  %v10519 = vadd.f32 %v9809, %v10301
  %v10520 = vadd.f32 %v9810, %v10306
  %v10521 = vadd.f32 %v9811, %v10311
  %v10522 = vadd.f32 %v9812, %v10316
  %v10523 = vadd.f32 %v9813, %v10321
  %v10524 = vadd.f32 %v9814, %v10326
  %v10525 = vadd.f32 %v9815, %v10331
  %v10526 = vadd.f32 %v9816, %v10336
  %v10527 = vadd.f32 %v9817, %v10341
  %v10528 = vadd.f32 %v9818, %v10346
  %v10529 = vadd.f32 %v9819, %v10351
  %v10530 = vadd.f32 %v9820, %v10356
  %v10531 = vadd.f32 %v9821, %v10361
  %v10532 = vadd.f32 %v9822, %v10366
  %v10533 = vadd.f32 %v9823, %v10371
  %v10534 = vadd.f32 %v9824, %v10376
  %v10535 = vadd.f32 %v9825, %v10381
  %v10536 = vadd.f32 %v9826, %v10386
  %v10537 = vadd.f32 %v9827, %v10391
  %v10538 = vadd.f32 %v9828, %v10396
  %v10539 = vadd.f32 %v9829, %v10401
  %v10540 = vadd.f32 %v9830, %v10406
  %v10541 = vadd.f32 %v9831, %v10411
  %v10542 = vadd.f32 %v9832, %v10416
  %v10543 = vadd.f32 %v9833, %v10421
  %v10544 = vadd.f32 %v9834, %v10426
  %v10545 = vadd.f32 %v9835, %v10431
  %v10546 = vadd.f32 %v9836, %v10436
  %v10547 = vadd.f32 %v9837, %v10441
  %v10548 = vadd.f32 %v9838, %v10446
  %v10549 = vadd.f32 %v9839, %v10451
  %v10550 = vadd.f32 %v9840, %v10456
  %v10551 = vadd.f32 %v9841, %v10461
  %v10552 = vadd.f32 %v9842, %v10466
  %v10553 = vadd.f32 %v9843, %v10471
  %v10554 = vadd.f32 %v9844, %v10476
  %v10555 = vadd.f32 %v9845, %v10481
  %v10556 = vadd.f32 %v9846, %v10486
  %v10557 = vadd.f32 %v9847, %v10491
  %v10558 = vld [vmem:[%s200 + $0x2] sm:$0xff]
  %v10559 = vld [vmem:[%s200 + $0xa] sm:$0xff]
  %v10560 = vld [vmem:[%s200 + $0x1a] sm:$0xff]
  %v10561 = vld [vmem:[%s200 + $0x22] sm:$0xff]
  %v10562 = vld [vmem:[%s200 + $0x32] sm:$0xff]
  %v10563 = vld [vmem:[%s200 + $0x3a] sm:$0xff]
  %v10564 = vld [vmem:[%s200 + $0x4a] sm:$0xff]
  %v10565 = vld [vmem:[%s200 + $0x52] sm:$0xff]
  %v10566 = vld [vmem:[%s200 + $0x62] sm:$0xff]
  %v10567 = vld [vmem:[%s200 + $0x6a] sm:$0xff]
  %v10568 = vld [vmem:[%s200 + $0x7a] sm:$0xff]
  %v10569 = vld [vmem:[%s200 + $0x82] sm:$0xff]
  %v10570 = vld [vmem:[%s200 + $0x92] sm:$0xff]
  %v10571 = vld [vmem:[%s200 + $0x9a] sm:$0xff]
  %v10572 = vld [vmem:[%s200 + $0xaa] sm:$0xff]
  %v10573 = vld [vmem:[%s200 + $0xb2] sm:$0xff]
  %v10574 = vld [vmem:[%s200 + $0xc2] sm:$0xff]
  %v10575 = vld [vmem:[%s200 + $0xca] sm:$0xff]
  %v10576 = vld [vmem:[%s200 + $0xda] sm:$0xff]
  %v10577 = vld [vmem:[%s200 + $0xe2] sm:$0xff]
  %v10578 = vld [vmem:[%s200 + $0xf2] sm:$0xff]
  %v10579 = vld [vmem:[%s200 + $0xfa] sm:$0xff]
  %v10580 = vld [vmem:[%s200 + $0x10a] sm:$0xff]
  %v10581 = vld [vmem:[%s200 + $0x112] sm:$0xff]
  %v10582 = vld [vmem:[%s200 + $0x122] sm:$0xff]
  %v10583 = vld [vmem:[%s200 + $0x12a] sm:$0xff]
  %v10584 = vld [vmem:[%s200 + $0x13a] sm:$0xff]
  %v10585 = vld [vmem:[%s200 + $0x142] sm:$0xff]
  %v10586 = vld [vmem:[%s200 + $0x152] sm:$0xff]
  %v10587 = vld [vmem:[%s200 + $0x15a] sm:$0xff]
  %v10588 = vld [vmem:[%s200 + $0x16a] sm:$0xff]
  %v10589 = vld [vmem:[%s200 + $0x172] sm:$0xff]
  %v10590 = vld [vmem:[%s200 + $0x1b2] sm:$0xff]
  %v10591 = vld [vmem:[%s200 + $0x1ba] sm:$0xff]
  %v10592 = vld [vmem:[%s200 + $0x1ca] sm:$0xff]
  %v10593 = vld [vmem:[%s200 + $0x1d2] sm:$0xff]
  %v10594 = vld [vmem:[%s200 + $0x1e2] sm:$0xff]
  %v10595 = vld [vmem:[%s200 + $0x1ea] sm:$0xff]
  %v10596 = vld [vmem:[%s200 + $0x1fa] sm:$0xff]
  %v10597 = vld [vmem:[%s200 + $0x202] sm:$0xff]
  %v10598 = vld [vmem:[%s200 + $0x212] sm:$0xff]
  %v10599 = vld [vmem:[%s200 + $0x21a] sm:$0xff]
  %v10600 = vld [vmem:[%s200 + $0x22a] sm:$0xff]
  %v10601 = vld [vmem:[%s200 + $0x232] sm:$0xff]
  %v10602 = vld [vmem:[%s200 + $0x242] sm:$0xff]
  %v10603 = vld [vmem:[%s200 + $0x24a] sm:$0xff]
  %v10604 = vld [vmem:[%s200 + $0x25a] sm:$0xff]
  %v10605 = vld [vmem:[%s200 + $0x262] sm:$0xff]
  %v10606 = vld [vmem:[%s200 + $0x272] sm:$0xff]
  %v10607 = vld [vmem:[%s200 + $0x27a] sm:$0xff]
  %v10608 = vld [vmem:[%s200 + $0x28a] sm:$0xff]
  %v10609 = vld [vmem:[%s200 + $0x292] sm:$0xff]
  %v10610 = vld [vmem:[%s200 + $0x2a2] sm:$0xff]
  %v10611 = vld [vmem:[%s200 + $0x2aa] sm:$0xff]
  %v10612 = vld [vmem:[%s200 + $0x2ba] sm:$0xff]
  %v10613 = vld [vmem:[%s200 + $0x2c2] sm:$0xff]
  %v10614 = vld [vmem:[%s200 + $0x2d2] sm:$0xff]
  %v10615 = vld [vmem:[%s200 + $0x2da] sm:$0xff]
  %v10616 = vld [vmem:[%s200 + $0x2ea] sm:$0xff]
  %v10617 = vld [vmem:[%s200 + $0x2f2] sm:$0xff]
  %v10618 = vld [vmem:[%s200 + $0x302] sm:$0xff]
  %v10619 = vld [vmem:[%s200 + $0x30a] sm:$0xff]
  %v10620 = vld [vmem:[%s200 + $0x31a] sm:$0xff]
  %v10621 = vld [vmem:[%s200 + $0x322] sm:$0xff]
  %s10622 = scalar_lea.vmem %s4, 20
  %v10623 = vld [vmem:[%s10622] sm:$0xf]
  %v10625 = vsel %vm26, %v10558, 0
  %v10628 = vsel %vm26, %v10559, 0
  %v10631 = vsel %vm26, %v10560, 0
  %v10634 = vsel %vm26, %v10561, 0
  %v10637 = vsel %vm26, %v10562, 0
  %v10640 = vsel %vm26, %v10563, 0
  %v10643 = vsel %vm26, %v10564, 0
  %v10646 = vsel %vm26, %v10565, 0
  %v10649 = vsel %vm26, %v10566, 0
  %v10652 = vsel %vm26, %v10567, 0
  %v10655 = vsel %vm26, %v10568, 0
  %v10658 = vsel %vm26, %v10569, 0
  %v10661 = vsel %vm26, %v10570, 0
  %v10664 = vsel %vm26, %v10571, 0
  %v10667 = vsel %vm26, %v10572, 0
  %v10670 = vsel %vm26, %v10573, 0
  %v10673 = vsel %vm26, %v10574, 0
  %v10676 = vsel %vm26, %v10575, 0
  %v10679 = vsel %vm26, %v10576, 0
  %v10682 = vsel %vm26, %v10577, 0
  %v10685 = vsel %vm26, %v10578, 0
  %v10688 = vsel %vm26, %v10579, 0
  %v10691 = vsel %vm26, %v10580, 0
  %v10694 = vsel %vm26, %v10581, 0
  %v10697 = vsel %vm26, %v10582, 0
  %v10700 = vsel %vm26, %v10583, 0
  %v10703 = vsel %vm26, %v10584, 0
  %v10706 = vsel %vm26, %v10585, 0
  %v10709 = vsel %vm26, %v10586, 0
  %v10712 = vsel %vm26, %v10587, 0
  %v10715 = vsel %vm26, %v10588, 0
  %v10718 = vsel %vm26, %v10589, 0
  %v10721 = vsel %vm26, %v10590, 0
  %v10724 = vsel %vm26, %v10591, 0
  %v10727 = vsel %vm26, %v10592, 0
  %v10730 = vsel %vm26, %v10593, 0
  %v10733 = vsel %vm26, %v10594, 0
  %v10736 = vsel %vm26, %v10595, 0
  %v10739 = vsel %vm26, %v10596, 0
  %v10742 = vsel %vm26, %v10597, 0
  %v10745 = vsel %vm26, %v10598, 0
  %v10748 = vsel %vm26, %v10599, 0
  %v10751 = vsel %vm26, %v10600, 0
  %v10754 = vsel %vm26, %v10601, 0
  %v10757 = vsel %vm26, %v10602, 0
  %v10760 = vsel %vm26, %v10603, 0
  %v10763 = vsel %vm26, %v10604, 0
  %v10766 = vsel %vm26, %v10605, 0
  %v10769 = vsel %vm26, %v10606, 0
  %v10772 = vsel %vm26, %v10607, 0
  %v10775 = vsel %vm26, %v10608, 0
  %v10778 = vsel %vm26, %v10609, 0
  %v10781 = vsel %vm26, %v10610, 0
  %v10784 = vsel %vm26, %v10611, 0
  %v10787 = vsel %vm26, %v10612, 0
  %v10790 = vsel %vm26, %v10613, 0
  %v10793 = vsel %vm26, %v10614, 0
  %v10796 = vsel %vm26, %v10615, 0
  %v10799 = vsel %vm26, %v10616, 0
  %v10802 = vsel %vm26, %v10617, 0
  %v10805 = vsel %vm26, %v10618, 0
  %v10808 = vsel %vm26, %v10619, 0
  %v10811 = vsel %vm26, %v10620, 0
  %v10814 = vsel %vm26, %v10621, 0
  %v10817 = vsel %vm588, %v10623, 0
  %10819 = vmatprep.subr.mxu0 0.0
  %10820 = vmatpush1.msra.mxu0 %v10817
  %10821 = vmatprep.subr.mxu0 0.0
  %10822 = vmatpush1.msra.mxu0 0.0
  %10823 = vmatprep.subr.mxu0 0.0
  %10824 = vmatpush1.msra.mxu0 0.0
  %10825 = vmatprep.subr.mxu0 0.0
  %10826 = vmatpush1.msra.mxu0 0.0
  %10827 = vmatprep.subr.mxu0 0.0
  %10828 = vmatpush1.msra.mxu0 0.0
  %10829 = vmatprep.subr.mxu0 0.0
  %10830 = vmatpush1.msra.mxu0 0.0
  %10831 = vmatprep.subr.mxu0 0.0
  %10832 = vmatpush1.msra.mxu0 0.0
  %10833 = vmatprep.subr.mxu0 0.0
  %10834 = vmatpush1.msra.mxu0 0.0
  %10835 = vmatprep.subr.mxu0 0.0
  %10836 = vmatpush1.msra.mxu0 0.0
  %10837 = vmatprep.subr.mxu0 0.0
  %10838 = vmatpush1.msra.mxu0 0.0
  %10839 = vmatprep.subr.mxu0 0.0
  %10840 = vmatpush1.msra.mxu0 0.0
  %10841 = vmatprep.subr.mxu0 0.0
  %10842 = vmatpush1.msra.mxu0 0.0
  %10843 = vmatprep.subr.mxu0 0.0
  %10844 = vmatpush1.msra.mxu0 0.0
  %10845 = vmatprep.subr.mxu0 0.0
  %10846 = vmatpush1.msra.mxu0 0.0
  %10847 = vmatprep.subr.mxu0 0.0
  %10848 = vmatpush1.msra.mxu0 0.0
  %10849 = vmatprep.subr.mxu0 0.0
  %10850 = vmatpush1.msra.mxu0 0.0
  %10851 = vmatprep.subr.mxu0 0.0
  %10852 = vmatpush1.msra.mxu0 0.0
  %10853 = vmatprep.subr.mxu0 0.0
  %10854 = vmatpush1.msra.mxu0 0.0
  %10855 = vmatprep.subr.mxu0 0.0
  %10856 = vmatpush1.msra.mxu0 0.0
  %10857 = vmatprep.subr.mxu0 0.0
  %10858 = vmatpush1.msra.mxu0 0.0
  %10859 = vmatprep.subr.mxu0 0.0
  %10860 = vmatpush1.msra.mxu0 0.0
  %10861 = vmatprep.subr.mxu0 0.0
  %10862 = vmatpush1.msra.mxu0 0.0
  %10863 = vmatprep.subr.mxu0 0.0
  %10864 = vmatpush1.msra.mxu0 0.0
  %10865 = vmatprep.subr.mxu0 0.0
  %10866 = vmatpush1.msra.mxu0 0.0
  %10867 = vmatprep.subr.mxu0 0.0
  %10868 = vmatpush1.msra.mxu0 0.0
  %10869 = vmatprep.subr.mxu0 0.0
  %10870 = vmatpush1.msra.mxu0 0.0
  %10871 = vmatprep.subr.mxu0 0.0
  %10872 = vmatpush1.msra.mxu0 0.0
  %10873 = vmatprep.subr.mxu0 0.0
  %10874 = vmatpush1.msra.mxu0 0.0
  %10875 = vmatprep.subr.mxu0 0.0
  %10876 = vmatpush1.msra.mxu0 0.0
  %10877 = vmatprep.subr.mxu0 0.0
  %10878 = vmatpush1.msra.mxu0 0.0
  %10879 = vmatprep.subr.mxu0 0.0
  %10880 = vmatpush1.msra.mxu0 0.0
  %10881 = vmatprep.subr.mxu0 0.0
  %10882 = vmatpush1.msra.mxu0 0.0
  %10883 = vmatprep.mubr.f32.mxu0 0.0
  %10884 = vmatmul.mubr.f32.gmra.mrb[0].mxu0 %v10625
  %v10885 = vpop.f32.mrb[0].mxu0
  %v10886 = vadd.f32 0.0, %v10885
  %v10887 = vpop.f32.mrb[0].mxu0
  %10888 = vmatprep.mubr.f32.mxu0 0.0
  %10889 = vmatmul.mubr.f32.gmra.mrb[0].mxu0 %v10628
  %v10890 = vpop.f32.mrb[0].mxu0
  %v10891 = vadd.f32 0.0, %v10890
  %v10892 = vpop.f32.mrb[0].mxu0
  %10893 = vmatprep.mubr.f32.mxu0 0.0
  %10894 = vmatmul.mubr.f32.gmra.mrb[0].mxu0 %v10631
  %v10895 = vpop.f32.mrb[0].mxu0
  %v10896 = vadd.f32 0.0, %v10895
  %v10897 = vpop.f32.mrb[0].mxu0
  %10898 = vmatprep.mubr.f32.mxu0 0.0
  %10899 = vmatmul.mubr.f32.gmra.mrb[0].mxu0 %v10634
  %v10900 = vpop.f32.mrb[0].mxu0
  %v10901 = vadd.f32 0.0, %v10900
  %v10902 = vpop.f32.mrb[0].mxu0
  %10903 = vmatprep.mubr.f32.mxu0 0.0
  %10904 = vmatmul.mubr.f32.gmra.mrb[0].mxu0 %v10637
  %v10905 = vpop.f32.mrb[0].mxu0
  %v10906 = vadd.f32 0.0, %v10905
  %v10907 = vpop.f32.mrb[0].mxu0
  %10908 = vmatprep.mubr.f32.mxu0 0.0
  %10909 = vmatmul.mubr.f32.gmra.mrb[0].mxu0 %v10640
  %v10910 = vpop.f32.mrb[0].mxu0
  %v10911 = vadd.f32 0.0, %v10910
  %v10912 = vpop.f32.mrb[0].mxu0
  %10913 = vmatprep.mubr.f32.mxu0 0.0
  %10914 = vmatmul.mubr.f32.gmra.mrb[0].mxu0 %v10643
  %v10915 = vpop.f32.mrb[0].mxu0
  %v10916 = vadd.f32 0.0, %v10915
  %v10917 = vpop.f32.mrb[0].mxu0
  %10918 = vmatprep.mubr.f32.mxu0 0.0
  %10919 = vmatmul.mubr.f32.gmra.mrb[0].mxu0 %v10646
  %v10920 = vpop.f32.mrb[0].mxu0
  %v10921 = vadd.f32 0.0, %v10920
  %v10922 = vpop.f32.mrb[0].mxu0
  %10923 = vmatprep.mubr.f32.mxu0 0.0
  %10924 = vmatmul.mubr.f32.gmra.mrb[0].mxu0 %v10649
  %v10925 = vpop.f32.mrb[0].mxu0
  %v10926 = vadd.f32 0.0, %v10925
  %v10927 = vpop.f32.mrb[0].mxu0
  %10928 = vmatprep.mubr.f32.mxu0 0.0
  %10929 = vmatmul.mubr.f32.gmra.mrb[0].mxu0 %v10652
  %v10930 = vpop.f32.mrb[0].mxu0
  %v10931 = vadd.f32 0.0, %v10930
  %v10932 = vpop.f32.mrb[0].mxu0
  %10933 = vmatprep.mubr.f32.mxu0 0.0
  %10934 = vmatmul.mubr.f32.gmra.mrb[0].mxu0 %v10655
  %v10935 = vpop.f32.mrb[0].mxu0
  %v10936 = vadd.f32 0.0, %v10935
  %v10937 = vpop.f32.mrb[0].mxu0
  %10938 = vmatprep.mubr.f32.mxu0 0.0
  %10939 = vmatmul.mubr.f32.gmra.mrb[0].mxu0 %v10658
  %v10940 = vpop.f32.mrb[0].mxu0
  %v10941 = vadd.f32 0.0, %v10940
  %v10942 = vpop.f32.mrb[0].mxu0
  %10943 = vmatprep.mubr.f32.mxu0 0.0
  %10944 = vmatmul.mubr.f32.gmra.mrb[0].mxu0 %v10661
  %v10945 = vpop.f32.mrb[0].mxu0
  %v10946 = vadd.f32 0.0, %v10945
  %v10947 = vpop.f32.mrb[0].mxu0
  %10948 = vmatprep.mubr.f32.mxu0 0.0
  %10949 = vmatmul.mubr.f32.gmra.mrb[0].mxu0 %v10664
  %v10950 = vpop.f32.mrb[0].mxu0
  %v10951 = vadd.f32 0.0, %v10950
  %v10952 = vpop.f32.mrb[0].mxu0
  %10953 = vmatprep.mubr.f32.mxu0 0.0
  %10954 = vmatmul.mubr.f32.gmra.mrb[0].mxu0 %v10667
  %v10955 = vpop.f32.mrb[0].mxu0
  %v10956 = vadd.f32 0.0, %v10955
  %v10957 = vpop.f32.mrb[0].mxu0
  %10958 = vmatprep.mubr.f32.mxu0 0.0
  %10959 = vmatmul.mubr.f32.gmra.mrb[0].mxu0 %v10670
  %v10960 = vpop.f32.mrb[0].mxu0
  %v10961 = vadd.f32 0.0, %v10960
  %v10962 = vpop.f32.mrb[0].mxu0
  %10963 = vmatprep.mubr.f32.mxu0 0.0
  %10964 = vmatmul.mubr.f32.gmra.mrb[0].mxu0 %v10673
  %v10965 = vpop.f32.mrb[0].mxu0
  %v10966 = vadd.f32 0.0, %v10965
  %v10967 = vpop.f32.mrb[0].mxu0
  %10968 = vmatprep.mubr.f32.mxu0 0.0
  %10969 = vmatmul.mubr.f32.gmra.mrb[0].mxu0 %v10676
  %v10970 = vpop.f32.mrb[0].mxu0
  %v10971 = vadd.f32 0.0, %v10970
  %v10972 = vpop.f32.mrb[0].mxu0
  %10973 = vmatprep.mubr.f32.mxu0 0.0
  %10974 = vmatmul.mubr.f32.gmra.mrb[0].mxu0 %v10679
  %v10975 = vpop.f32.mrb[0].mxu0
  %v10976 = vadd.f32 0.0, %v10975
  %v10977 = vpop.f32.mrb[0].mxu0
  %10978 = vmatprep.mubr.f32.mxu0 0.0
  %10979 = vmatmul.mubr.f32.gmra.mrb[0].mxu0 %v10682
  %v10980 = vpop.f32.mrb[0].mxu0
  %v10981 = vadd.f32 0.0, %v10980
  %v10982 = vpop.f32.mrb[0].mxu0
  %10983 = vmatprep.mubr.f32.mxu0 0.0
  %10984 = vmatmul.mubr.f32.gmra.mrb[0].mxu0 %v10685
  %v10985 = vpop.f32.mrb[0].mxu0
  %v10986 = vadd.f32 0.0, %v10985
  %v10987 = vpop.f32.mrb[0].mxu0
  %10988 = vmatprep.mubr.f32.mxu0 0.0
  %10989 = vmatmul.mubr.f32.gmra.mrb[0].mxu0 %v10688
  %v10990 = vpop.f32.mrb[0].mxu0
  %v10991 = vadd.f32 0.0, %v10990
  %v10992 = vpop.f32.mrb[0].mxu0
  %10993 = vmatprep.mubr.f32.mxu0 0.0
  %10994 = vmatmul.mubr.f32.gmra.mrb[0].mxu0 %v10691
  %v10995 = vpop.f32.mrb[0].mxu0
  %v10996 = vadd.f32 0.0, %v10995
  %v10997 = vpop.f32.mrb[0].mxu0
  %10998 = vmatprep.mubr.f32.mxu0 0.0
  %10999 = vmatmul.mubr.f32.gmra.mrb[0].mxu0 %v10694
  %v11000 = vpop.f32.mrb[0].mxu0
  %v11001 = vadd.f32 0.0, %v11000
  %v11002 = vpop.f32.mrb[0].mxu0
  %11003 = vmatprep.mubr.f32.mxu0 0.0
  %11004 = vmatmul.mubr.f32.gmra.mrb[0].mxu0 %v10697
  %v11005 = vpop.f32.mrb[0].mxu0
  %v11006 = vadd.f32 0.0, %v11005
  %v11007 = vpop.f32.mrb[0].mxu0
  %11008 = vmatprep.mubr.f32.mxu0 0.0
  %11009 = vmatmul.mubr.f32.gmra.mrb[0].mxu0 %v10700
  %v11010 = vpop.f32.mrb[0].mxu0
  %v11011 = vadd.f32 0.0, %v11010
  %v11012 = vpop.f32.mrb[0].mxu0
  %11013 = vmatprep.mubr.f32.mxu0 0.0
  %11014 = vmatmul.mubr.f32.gmra.mrb[0].mxu0 %v10703
  %v11015 = vpop.f32.mrb[0].mxu0
  %v11016 = vadd.f32 0.0, %v11015
  %v11017 = vpop.f32.mrb[0].mxu0
  %11018 = vmatprep.mubr.f32.mxu0 0.0
  %11019 = vmatmul.mubr.f32.gmra.mrb[0].mxu0 %v10706
  %v11020 = vpop.f32.mrb[0].mxu0
  %v11021 = vadd.f32 0.0, %v11020
  %v11022 = vpop.f32.mrb[0].mxu0
  %11023 = vmatprep.mubr.f32.mxu0 0.0
  %11024 = vmatmul.mubr.f32.gmra.mrb[0].mxu0 %v10709
  %v11025 = vpop.f32.mrb[0].mxu0
  %v11026 = vadd.f32 0.0, %v11025
  %v11027 = vpop.f32.mrb[0].mxu0
  %11028 = vmatprep.mubr.f32.mxu0 0.0
  %11029 = vmatmul.mubr.f32.gmra.mrb[0].mxu0 %v10712
  %v11030 = vpop.f32.mrb[0].mxu0
  %v11031 = vadd.f32 0.0, %v11030
  %v11032 = vpop.f32.mrb[0].mxu0
  %11033 = vmatprep.mubr.f32.mxu0 0.0
  %11034 = vmatmul.mubr.f32.gmra.mrb[0].mxu0 %v10715
  %v11035 = vpop.f32.mrb[0].mxu0
  %v11036 = vadd.f32 0.0, %v11035
  %v11037 = vpop.f32.mrb[0].mxu0
  %11038 = vmatprep.mubr.f32.mxu0 0.0
  %11039 = vmatmul.mubr.f32.gmra.mrb[0].mxu0 %v10718
  %v11040 = vpop.f32.mrb[0].mxu0
  %v11041 = vadd.f32 0.0, %v11040
  %v11042 = vpop.f32.mrb[0].mxu0
  %11043 = vmatprep.mubr.f32.mxu0 0.0
  %11044 = vmatmul.mubr.f32.gmra.mrb[0].mxu0 %v10721
  %v11045 = vpop.f32.mrb[0].mxu0
  %v11046 = vadd.f32 0.0, %v11045
  %v11047 = vpop.f32.mrb[0].mxu0
  %11048 = vmatprep.mubr.f32.mxu0 0.0
  %11049 = vmatmul.mubr.f32.gmra.mrb[0].mxu0 %v10724
  %v11050 = vpop.f32.mrb[0].mxu0
  %v11051 = vadd.f32 0.0, %v11050
  %v11052 = vpop.f32.mrb[0].mxu0
  %11053 = vmatprep.mubr.f32.mxu0 0.0
  %11054 = vmatmul.mubr.f32.gmra.mrb[0].mxu0 %v10727
  %v11055 = vpop.f32.mrb[0].mxu0
  %v11056 = vadd.f32 0.0, %v11055
  %v11057 = vpop.f32.mrb[0].mxu0
  %11058 = vmatprep.mubr.f32.mxu0 0.0
  %11059 = vmatmul.mubr.f32.gmra.mrb[0].mxu0 %v10730
  %v11060 = vpop.f32.mrb[0].mxu0
  %v11061 = vadd.f32 0.0, %v11060
  %v11062 = vpop.f32.mrb[0].mxu0
  %11063 = vmatprep.mubr.f32.mxu0 0.0
  %11064 = vmatmul.mubr.f32.gmra.mrb[0].mxu0 %v10733
  %v11065 = vpop.f32.mrb[0].mxu0
  %v11066 = vadd.f32 0.0, %v11065
  %v11067 = vpop.f32.mrb[0].mxu0
  %11068 = vmatprep.mubr.f32.mxu0 0.0
  %11069 = vmatmul.mubr.f32.gmra.mrb[0].mxu0 %v10736
  %v11070 = vpop.f32.mrb[0].mxu0
  %v11071 = vadd.f32 0.0, %v11070
  %v11072 = vpop.f32.mrb[0].mxu0
  %11073 = vmatprep.mubr.f32.mxu0 0.0
  %11074 = vmatmul.mubr.f32.gmra.mrb[0].mxu0 %v10739
  %v11075 = vpop.f32.mrb[0].mxu0
  %v11076 = vadd.f32 0.0, %v11075
  %v11077 = vpop.f32.mrb[0].mxu0
  %11078 = vmatprep.mubr.f32.mxu0 0.0
  %11079 = vmatmul.mubr.f32.gmra.mrb[0].mxu0 %v10742
  %v11080 = vpop.f32.mrb[0].mxu0
  %v11081 = vadd.f32 0.0, %v11080
  %v11082 = vpop.f32.mrb[0].mxu0
  %11083 = vmatprep.mubr.f32.mxu0 0.0
  %11084 = vmatmul.mubr.f32.gmra.mrb[0].mxu0 %v10745
  %v11085 = vpop.f32.mrb[0].mxu0
  %v11086 = vadd.f32 0.0, %v11085
  %v11087 = vpop.f32.mrb[0].mxu0
  %11088 = vmatprep.mubr.f32.mxu0 0.0
  %11089 = vmatmul.mubr.f32.gmra.mrb[0].mxu0 %v10748
  %v11090 = vpop.f32.mrb[0].mxu0
  %v11091 = vadd.f32 0.0, %v11090
  %v11092 = vpop.f32.mrb[0].mxu0
  %11093 = vmatprep.mubr.f32.mxu0 0.0
  %11094 = vmatmul.mubr.f32.gmra.mrb[0].mxu0 %v10751
  %v11095 = vpop.f32.mrb[0].mxu0
  %v11096 = vadd.f32 0.0, %v11095
  %v11097 = vpop.f32.mrb[0].mxu0
  %11098 = vmatprep.mubr.f32.mxu0 0.0
  %11099 = vmatmul.mubr.f32.gmra.mrb[0].mxu0 %v10754
  %v11100 = vpop.f32.mrb[0].mxu0
  %v11101 = vadd.f32 0.0, %v11100
  %v11102 = vpop.f32.mrb[0].mxu0
  %11103 = vmatprep.mubr.f32.mxu0 0.0
  %11104 = vmatmul.mubr.f32.gmra.mrb[0].mxu0 %v10757
  %v11105 = vpop.f32.mrb[0].mxu0
  %v11106 = vadd.f32 0.0, %v11105
  %v11107 = vpop.f32.mrb[0].mxu0
  %11108 = vmatprep.mubr.f32.mxu0 0.0
  %11109 = vmatmul.mubr.f32.gmra.mrb[0].mxu0 %v10760
  %v11110 = vpop.f32.mrb[0].mxu0
  %v11111 = vadd.f32 0.0, %v11110
  %v11112 = vpop.f32.mrb[0].mxu0
  %11113 = vmatprep.mubr.f32.mxu0 0.0
  %11114 = vmatmul.mubr.f32.gmra.mrb[0].mxu0 %v10763
  %v11115 = vpop.f32.mrb[0].mxu0
  %v11116 = vadd.f32 0.0, %v11115
  %v11117 = vpop.f32.mrb[0].mxu0
  %11118 = vmatprep.mubr.f32.mxu0 0.0
  %11119 = vmatmul.mubr.f32.gmra.mrb[0].mxu0 %v10766
  %v11120 = vpop.f32.mrb[0].mxu0
  %v11121 = vadd.f32 0.0, %v11120
  %v11122 = vpop.f32.mrb[0].mxu0
  %11123 = vmatprep.mubr.f32.mxu0 0.0
  %11124 = vmatmul.mubr.f32.gmra.mrb[0].mxu0 %v10769
  %v11125 = vpop.f32.mrb[0].mxu0
  %v11126 = vadd.f32 0.0, %v11125
  %v11127 = vpop.f32.mrb[0].mxu0
  %11128 = vmatprep.mubr.f32.mxu0 0.0
  %11129 = vmatmul.mubr.f32.gmra.mrb[0].mxu0 %v10772
  %v11130 = vpop.f32.mrb[0].mxu0
  %v11131 = vadd.f32 0.0, %v11130
  %v11132 = vpop.f32.mrb[0].mxu0
  %11133 = vmatprep.mubr.f32.mxu0 0.0
  %11134 = vmatmul.mubr.f32.gmra.mrb[0].mxu0 %v10775
  %v11135 = vpop.f32.mrb[0].mxu0
  %v11136 = vadd.f32 0.0, %v11135
  %v11137 = vpop.f32.mrb[0].mxu0
  %11138 = vmatprep.mubr.f32.mxu0 0.0
  %11139 = vmatmul.mubr.f32.gmra.mrb[0].mxu0 %v10778
  %v11140 = vpop.f32.mrb[0].mxu0
  %v11141 = vadd.f32 0.0, %v11140
  %v11142 = vpop.f32.mrb[0].mxu0
  %11143 = vmatprep.mubr.f32.mxu0 0.0
  %11144 = vmatmul.mubr.f32.gmra.mrb[0].mxu0 %v10781
  %v11145 = vpop.f32.mrb[0].mxu0
  %v11146 = vadd.f32 0.0, %v11145
  %v11147 = vpop.f32.mrb[0].mxu0
  %11148 = vmatprep.mubr.f32.mxu0 0.0
  %11149 = vmatmul.mubr.f32.gmra.mrb[0].mxu0 %v10784
  %v11150 = vpop.f32.mrb[0].mxu0
  %v11151 = vadd.f32 0.0, %v11150
  %v11152 = vpop.f32.mrb[0].mxu0
  %11153 = vmatprep.mubr.f32.mxu0 0.0
  %11154 = vmatmul.mubr.f32.gmra.mrb[0].mxu0 %v10787
  %v11155 = vpop.f32.mrb[0].mxu0
  %v11156 = vadd.f32 0.0, %v11155
  %v11157 = vpop.f32.mrb[0].mxu0
  %11158 = vmatprep.mubr.f32.mxu0 0.0
  %11159 = vmatmul.mubr.f32.gmra.mrb[0].mxu0 %v10790
  %v11160 = vpop.f32.mrb[0].mxu0
  %v11161 = vadd.f32 0.0, %v11160
  %v11162 = vpop.f32.mrb[0].mxu0
  %11163 = vmatprep.mubr.f32.mxu0 0.0
  %11164 = vmatmul.mubr.f32.gmra.mrb[0].mxu0 %v10793
  %v11165 = vpop.f32.mrb[0].mxu0
  %v11166 = vadd.f32 0.0, %v11165
  %v11167 = vpop.f32.mrb[0].mxu0
  %11168 = vmatprep.mubr.f32.mxu0 0.0
  %11169 = vmatmul.mubr.f32.gmra.mrb[0].mxu0 %v10796
  %v11170 = vpop.f32.mrb[0].mxu0
  %v11171 = vadd.f32 0.0, %v11170
  %v11172 = vpop.f32.mrb[0].mxu0
  %11173 = vmatprep.mubr.f32.mxu0 0.0
  %11174 = vmatmul.mubr.f32.gmra.mrb[0].mxu0 %v10799
  %v11175 = vpop.f32.mrb[0].mxu0
  %v11176 = vadd.f32 0.0, %v11175
  %v11177 = vpop.f32.mrb[0].mxu0
  %11178 = vmatprep.mubr.f32.mxu0 0.0
  %11179 = vmatmul.mubr.f32.gmra.mrb[0].mxu0 %v10802
  %v11180 = vpop.f32.mrb[0].mxu0
  %v11181 = vadd.f32 0.0, %v11180
  %v11182 = vpop.f32.mrb[0].mxu0
  %11183 = vmatprep.mubr.f32.mxu0 0.0
  %11184 = vmatmul.mubr.f32.gmra.mrb[0].mxu0 %v10805
  %v11185 = vpop.f32.mrb[0].mxu0
  %v11186 = vadd.f32 0.0, %v11185
  %v11187 = vpop.f32.mrb[0].mxu0
  %11188 = vmatprep.mubr.f32.mxu0 0.0
  %11189 = vmatmul.mubr.f32.gmra.mrb[0].mxu0 %v10808
  %v11190 = vpop.f32.mrb[0].mxu0
  %v11191 = vadd.f32 0.0, %v11190
  %v11192 = vpop.f32.mrb[0].mxu0
  %11193 = vmatprep.mubr.f32.mxu0 0.0
  %11194 = vmatmul.mubr.f32.gmra.mrb[0].mxu0 %v10811
  %v11195 = vpop.f32.mrb[0].mxu0
  %v11196 = vadd.f32 0.0, %v11195
  %v11197 = vpop.f32.mrb[0].mxu0
  %11198 = vmatprep.mubr.f32.mxu0 0.0
  %11199 = vmatmul.mubr.f32.gmra.mrb[0].mxu0 %v10814
  %v11200 = vpop.f32.mrb[0].mxu0
  %v11201 = vadd.f32 0.0, %v11200
  %v11202 = vpop.f32.mrb[0].mxu0
  %11203 = vdwg.mxu0
  %v11204 = vadd.f32 %v10494, %v10886
  %v11205 = vadd.f32 %v10495, %v10891
  %v11206 = vadd.f32 %v10496, %v10896
  %v11207 = vadd.f32 %v10497, %v10901
  %v11208 = vadd.f32 %v10498, %v10906
  %v11209 = vadd.f32 %v10499, %v10911
  %v11210 = vadd.f32 %v10500, %v10916
  %v11211 = vadd.f32 %v10501, %v10921
  %v11212 = vadd.f32 %v10502, %v10926
  %v11213 = vadd.f32 %v10503, %v10931
  %v11214 = vadd.f32 %v10504, %v10936
  %v11215 = vadd.f32 %v10505, %v10941
  %v11216 = vadd.f32 %v10506, %v10946
  %v11217 = vadd.f32 %v10507, %v10951
  %v11218 = vadd.f32 %v10508, %v10956
  %v11219 = vadd.f32 %v10509, %v10961
  %v11220 = vadd.f32 %v10510, %v10966
  %v11221 = vadd.f32 %v10511, %v10971
  %v11222 = vadd.f32 %v10512, %v10976
  %v11223 = vadd.f32 %v10513, %v10981
  %v11224 = vadd.f32 %v10514, %v10986
  %v11225 = vadd.f32 %v10515, %v10991
  %v11226 = vadd.f32 %v10516, %v10996
  %v11227 = vadd.f32 %v10517, %v11001
  %v11228 = vadd.f32 %v10518, %v11006
  %v11229 = vadd.f32 %v10519, %v11011
  %v11230 = vadd.f32 %v10520, %v11016
  %v11231 = vadd.f32 %v10521, %v11021
  %v11232 = vadd.f32 %v10522, %v11026
  %v11233 = vadd.f32 %v10523, %v11031
  %v11234 = vadd.f32 %v10524, %v11036
  %v11235 = vadd.f32 %v10525, %v11041
  %v11236 = vadd.f32 %v10526, %v11046
  %v11237 = vadd.f32 %v10527, %v11051
  %v11238 = vadd.f32 %v10528, %v11056
  %v11239 = vadd.f32 %v10529, %v11061
  %v11240 = vadd.f32 %v10530, %v11066
  %v11241 = vadd.f32 %v10531, %v11071
  %v11242 = vadd.f32 %v10532, %v11076
  %v11243 = vadd.f32 %v10533, %v11081
  %v11244 = vadd.f32 %v10534, %v11086
  %v11245 = vadd.f32 %v10535, %v11091
  %v11246 = vadd.f32 %v10536, %v11096
  %v11247 = vadd.f32 %v10537, %v11101
  %v11248 = vadd.f32 %v10538, %v11106
  %v11249 = vadd.f32 %v10539, %v11111
  %v11250 = vadd.f32 %v10540, %v11116
  %v11251 = vadd.f32 %v10541, %v11121
  %v11252 = vadd.f32 %v10542, %v11126
  %v11253 = vadd.f32 %v10543, %v11131
  %v11254 = vadd.f32 %v10544, %v11136
  %v11255 = vadd.f32 %v10545, %v11141
  %v11256 = vadd.f32 %v10546, %v11146
  %v11257 = vadd.f32 %v10547, %v11151
  %v11258 = vadd.f32 %v10548, %v11156
  %v11259 = vadd.f32 %v10549, %v11161
  %v11260 = vadd.f32 %v10550, %v11166
  %v11261 = vadd.f32 %v10551, %v11171
  %v11262 = vadd.f32 %v10552, %v11176
  %v11263 = vadd.f32 %v10553, %v11181
  %v11264 = vadd.f32 %v10554, %v11186
  %v11265 = vadd.f32 %v10555, %v11191
  %v11266 = vadd.f32 %v10556, %v11196
  %v11267 = vadd.f32 %v10557, %v11201
  %v11268 = vld [vmem:[%s4397] sm:$0xff]
  %v11269 = vld [vmem:[%s4397 + $0x8] sm:$0xff]
  %v11270 = vld [vmem:[%s4397 + $0x18] sm:$0xff]
  %v11271 = vld [vmem:[%s4397 + $0x20] sm:$0xff]
  %v11272 = vld [vmem:[%s4397 + $0x30] sm:$0xff]
  %v11273 = vld [vmem:[%s4397 + $0x38] sm:$0xff]
  %v11274 = vld [vmem:[%s4397 + $0x48] sm:$0xff]
  %v11275 = vld [vmem:[%s4397 + $0x50] sm:$0xff]
  %v11276 = vld [vmem:[%s4397 + $0x60] sm:$0xff]
  %v11277 = vld [vmem:[%s4397 + $0x68] sm:$0xff]
  %v11278 = vld [vmem:[%s4397 + $0x78] sm:$0xff]
  %v11279 = vld [vmem:[%s4397 + $0x80] sm:$0xff]
  %v11280 = vld [vmem:[%s4397 + $0x90] sm:$0xff]
  %v11281 = vld [vmem:[%s4397 + $0x98] sm:$0xff]
  %v11282 = vld [vmem:[%s4397 + $0xa8] sm:$0xff]
  %v11283 = vld [vmem:[%s4397 + $0xb0] sm:$0xff]
  %v11284 = vld [vmem:[%s4397 + $0xc0] sm:$0xff]
  %v11285 = vld [vmem:[%s4397 + $0xc8] sm:$0xff]
  %v11286 = vld [vmem:[%s4397 + $0xd8] sm:$0xff]
  %v11287 = vld [vmem:[%s4397 + $0xe0] sm:$0xff]
  %v11288 = vld [vmem:[%s4397 + $0xf0] sm:$0xff]
  %v11289 = vld [vmem:[%s4397 + $0xf8] sm:$0xff]
  %v11290 = vld [vmem:[%s4397 + $0x108] sm:$0xff]
  %v11291 = vld [vmem:[%s4397 + $0x110] sm:$0xff]
  %v11292 = vld [vmem:[%s4397 + $0x120] sm:$0xff]
  %v11293 = vld [vmem:[%s4397 + $0x128] sm:$0xff]
  %v11294 = vld [vmem:[%s4397 + $0x138] sm:$0xff]
  %v11295 = vld [vmem:[%s4397 + $0x140] sm:$0xff]
  %v11296 = vld [vmem:[%s4397 + $0x150] sm:$0xff]
  %v11297 = vld [vmem:[%s4397 + $0x158] sm:$0xff]
  %v11298 = vld [vmem:[%s4397 + $0x168] sm:$0xff]
  %v11299 = vld [vmem:[%s4397 + $0x170] sm:$0xff]
  %v11300 = vld [vmem:[%s4397 + $0x1b0] sm:$0xff]
  %v11301 = vld [vmem:[%s4397 + $0x1b8] sm:$0xff]
  %v11302 = vld [vmem:[%s4397 + $0x1c8] sm:$0xff]
  %v11303 = vld [vmem:[%s4397 + $0x1d0] sm:$0xff]
  %v11304 = vld [vmem:[%s4397 + $0x1e0] sm:$0xff]
  %v11305 = vld [vmem:[%s4397 + $0x1e8] sm:$0xff]
  %v11306 = vld [vmem:[%s4397 + $0x1f8] sm:$0xff]
  %v11307 = vld [vmem:[%s4397 + $0x200] sm:$0xff]
  %v11308 = vld [vmem:[%s4397 + $0x210] sm:$0xff]
  %v11309 = vld [vmem:[%s4397 + $0x218] sm:$0xff]
  %v11310 = vld [vmem:[%s4397 + $0x228] sm:$0xff]
  %v11311 = vld [vmem:[%s4397 + $0x230] sm:$0xff]
  %v11312 = vld [vmem:[%s4397 + $0x240] sm:$0xff]
  %v11313 = vld [vmem:[%s4397 + $0x248] sm:$0xff]
  %v11314 = vld [vmem:[%s4397 + $0x258] sm:$0xff]
  %v11315 = vld [vmem:[%s4397 + $0x260] sm:$0xff]
  %v11316 = vld [vmem:[%s4397 + $0x270] sm:$0xff]
  %v11317 = vld [vmem:[%s4397 + $0x278] sm:$0xff]
  %v11318 = vld [vmem:[%s4397 + $0x288] sm:$0xff]
  %v11319 = vld [vmem:[%s4397 + $0x290] sm:$0xff]
  %v11320 = vld [vmem:[%s4397 + $0x2a0] sm:$0xff]
  %v11321 = vld [vmem:[%s4397 + $0x2a8] sm:$0xff]
  %v11322 = vld [vmem:[%s4397 + $0x2b8] sm:$0xff]
  %v11323 = vld [vmem:[%s4397 + $0x2c0] sm:$0xff]
  %v11324 = vld [vmem:[%s4397 + $0x2d0] sm:$0xff]
  %v11325 = vld [vmem:[%s4397 + $0x2d8] sm:$0xff]
  %v11326 = vld [vmem:[%s4397 + $0x2e8] sm:$0xff]
  %v11327 = vld [vmem:[%s4397 + $0x2f0] sm:$0xff]
  %v11328 = vld [vmem:[%s4397 + $0x300] sm:$0xff]
  %v11329 = vld [vmem:[%s4397 + $0x308] sm:$0xff]
  %v11330 = vld [vmem:[%s4397 + $0x318] sm:$0xff]
  %v11331 = vld [vmem:[%s4397 + $0x320] sm:$0xff]
  %s11332 = scalar_lea.vmem %s4, 24
  %v11333 = vld [vmem:[%s11332] sm:$0xf]
  %v11335 = vsel %vm26, %v11268, 0
  %v11338 = vsel %vm26, %v11269, 0
  %v11341 = vsel %vm26, %v11270, 0
  %v11344 = vsel %vm26, %v11271, 0
  %v11347 = vsel %vm26, %v11272, 0
  %v11350 = vsel %vm26, %v11273, 0
  %v11353 = vsel %vm26, %v11274, 0
  %v11356 = vsel %vm26, %v11275, 0
  %v11359 = vsel %vm26, %v11276, 0
  %v11362 = vsel %vm26, %v11277, 0
  %v11365 = vsel %vm26, %v11278, 0
  %v11368 = vsel %vm26, %v11279, 0
  %v11371 = vsel %vm26, %v11280, 0
  %v11374 = vsel %vm26, %v11281, 0
  %v11377 = vsel %vm26, %v11282, 0
  %v11380 = vsel %vm26, %v11283, 0
  %v11383 = vsel %vm26, %v11284, 0
  %v11386 = vsel %vm26, %v11285, 0
  %v11389 = vsel %vm26, %v11286, 0
  %v11392 = vsel %vm26, %v11287, 0
  %v11395 = vsel %vm26, %v11288, 0
  %v11398 = vsel %vm26, %v11289, 0
  %v11401 = vsel %vm26, %v11290, 0
  %v11404 = vsel %vm26, %v11291, 0
  %v11407 = vsel %vm26, %v11292, 0
  %v11410 = vsel %vm26, %v11293, 0
  %v11413 = vsel %vm26, %v11294, 0
  %v11416 = vsel %vm26, %v11295, 0
  %v11419 = vsel %vm26, %v11296, 0
  %v11422 = vsel %vm26, %v11297, 0
  %v11425 = vsel %vm26, %v11298, 0
  %v11428 = vsel %vm26, %v11299, 0
  %v11431 = vsel %vm26, %v11300, 0
  %v11434 = vsel %vm26, %v11301, 0
  %v11437 = vsel %vm26, %v11302, 0
  %v11440 = vsel %vm26, %v11303, 0
  %v11443 = vsel %vm26, %v11304, 0
  %v11446 = vsel %vm26, %v11305, 0
  %v11449 = vsel %vm26, %v11306, 0
  %v11452 = vsel %vm26, %v11307, 0
  %v11455 = vsel %vm26, %v11308, 0
  %v11458 = vsel %vm26, %v11309, 0
  %v11461 = vsel %vm26, %v11310, 0
  %v11464 = vsel %vm26, %v11311, 0
  %v11467 = vsel %vm26, %v11312, 0
  %v11470 = vsel %vm26, %v11313, 0
  %v11473 = vsel %vm26, %v11314, 0
  %v11476 = vsel %vm26, %v11315, 0
  %v11479 = vsel %vm26, %v11316, 0
  %v11482 = vsel %vm26, %v11317, 0
  %v11485 = vsel %vm26, %v11318, 0
  %v11488 = vsel %vm26, %v11319, 0
  %v11491 = vsel %vm26, %v11320, 0
  %v11494 = vsel %vm26, %v11321, 0
  %v11497 = vsel %vm26, %v11322, 0
  %v11500 = vsel %vm26, %v11323, 0
  %v11503 = vsel %vm26, %v11324, 0
  %v11506 = vsel %vm26, %v11325, 0
  %v11509 = vsel %vm26, %v11326, 0
  %v11512 = vsel %vm26, %v11327, 0
  %v11515 = vsel %vm26, %v11328, 0
  %v11518 = vsel %vm26, %v11329, 0
  %v11521 = vsel %vm26, %v11330, 0
  %v11524 = vsel %vm26, %v11331, 0
  %v11527 = vsel %vm588, %v11333, 0
  %11529 = vmatprep.subr.mxu0 0.0
  %11530 = vmatpush1.msra.mxu0 %v11527
  %11531 = vmatprep.subr.mxu0 0.0
  %11532 = vmatpush1.msra.mxu0 0.0
  %11533 = vmatprep.subr.mxu0 0.0
  %11534 = vmatpush1.msra.mxu0 0.0
  %11535 = vmatprep.subr.mxu0 0.0
  %11536 = vmatpush1.msra.mxu0 0.0
  %11537 = vmatprep.subr.mxu0 0.0
  %11538 = vmatpush1.msra.mxu0 0.0
  %11539 = vmatprep.subr.mxu0 0.0
  %11540 = vmatpush1.msra.mxu0 0.0
  %11541 = vmatprep.subr.mxu0 0.0
  %11542 = vmatpush1.msra.mxu0 0.0
  %11543 = vmatprep.subr.mxu0 0.0
  %11544 = vmatpush1.msra.mxu0 0.0
  %11545 = vmatprep.subr.mxu0 0.0
  %11546 = vmatpush1.msra.mxu0 0.0
  %11547 = vmatprep.subr.mxu0 0.0
  %11548 = vmatpush1.msra.mxu0 0.0
  %11549 = vmatprep.subr.mxu0 0.0
  %11550 = vmatpush1.msra.mxu0 0.0
  %11551 = vmatprep.subr.mxu0 0.0
  %11552 = vmatpush1.msra.mxu0 0.0
  %11553 = vmatprep.subr.mxu0 0.0
  %11554 = vmatpush1.msra.mxu0 0.0
  %11555 = vmatprep.subr.mxu0 0.0
  %11556 = vmatpush1.msra.mxu0 0.0
  %11557 = vmatprep.subr.mxu0 0.0
  %11558 = vmatpush1.msra.mxu0 0.0
  %11559 = vmatprep.subr.mxu0 0.0
  %11560 = vmatpush1.msra.mxu0 0.0
  %11561 = vmatprep.subr.mxu0 0.0
  %11562 = vmatpush1.msra.mxu0 0.0
  %11563 = vmatprep.subr.mxu0 0.0
  %11564 = vmatpush1.msra.mxu0 0.0
  %11565 = vmatprep.subr.mxu0 0.0
  %11566 = vmatpush1.msra.mxu0 0.0
  %11567 = vmatprep.subr.mxu0 0.0
  %11568 = vmatpush1.msra.mxu0 0.0
  %11569 = vmatprep.subr.mxu0 0.0
  %11570 = vmatpush1.msra.mxu0 0.0
  %11571 = vmatprep.subr.mxu0 0.0
  %11572 = vmatpush1.msra.mxu0 0.0
  %11573 = vmatprep.subr.mxu0 0.0
  %11574 = vmatpush1.msra.mxu0 0.0
  %11575 = vmatprep.subr.mxu0 0.0
  %11576 = vmatpush1.msra.mxu0 0.0
  %11577 = vmatprep.subr.mxu0 0.0
  %11578 = vmatpush1.msra.mxu0 0.0
  %11579 = vmatprep.subr.mxu0 0.0
  %11580 = vmatpush1.msra.mxu0 0.0
  %11581 = vmatprep.subr.mxu0 0.0
  %11582 = vmatpush1.msra.mxu0 0.0
  %11583 = vmatprep.subr.mxu0 0.0
  %11584 = vmatpush1.msra.mxu0 0.0
  %11585 = vmatprep.subr.mxu0 0.0
  %11586 = vmatpush1.msra.mxu0 0.0
  %11587 = vmatprep.subr.mxu0 0.0
  %11588 = vmatpush1.msra.mxu0 0.0
  %11589 = vmatprep.subr.mxu0 0.0
  %11590 = vmatpush1.msra.mxu0 0.0
  %11591 = vmatprep.subr.mxu0 0.0
  %11592 = vmatpush1.msra.mxu0 0.0
  %11593 = vmatprep.mubr.f32.mxu0 0.0
  %11594 = vmatmul.mubr.f32.gmra.mrb[0].mxu0 %v11335
  %v11595 = vpop.f32.mrb[0].mxu0
  %v11596 = vadd.f32 0.0, %v11595
  %v11597 = vpop.f32.mrb[0].mxu0
  %11598 = vmatprep.mubr.f32.mxu0 0.0
  %11599 = vmatmul.mubr.f32.gmra.mrb[0].mxu0 %v11338
  %v11600 = vpop.f32.mrb[0].mxu0
  %v11601 = vadd.f32 0.0, %v11600
  %v11602 = vpop.f32.mrb[0].mxu0
  %11603 = vmatprep.mubr.f32.mxu0 0.0
  %11604 = vmatmul.mubr.f32.gmra.mrb[0].mxu0 %v11341
  %v11605 = vpop.f32.mrb[0].mxu0
  %v11606 = vadd.f32 0.0, %v11605
  %v11607 = vpop.f32.mrb[0].mxu0
  %11608 = vmatprep.mubr.f32.mxu0 0.0
  %11609 = vmatmul.mubr.f32.gmra.mrb[0].mxu0 %v11344
  %v11610 = vpop.f32.mrb[0].mxu0
  %v11611 = vadd.f32 0.0, %v11610
  %v11612 = vpop.f32.mrb[0].mxu0
  %11613 = vmatprep.mubr.f32.mxu0 0.0
  %11614 = vmatmul.mubr.f32.gmra.mrb[0].mxu0 %v11347
  %v11615 = vpop.f32.mrb[0].mxu0
  %v11616 = vadd.f32 0.0, %v11615
  %v11617 = vpop.f32.mrb[0].mxu0
  %11618 = vmatprep.mubr.f32.mxu0 0.0
  %11619 = vmatmul.mubr.f32.gmra.mrb[0].mxu0 %v11350
  %v11620 = vpop.f32.mrb[0].mxu0
  %v11621 = vadd.f32 0.0, %v11620
  %v11622 = vpop.f32.mrb[0].mxu0
  %11623 = vmatprep.mubr.f32.mxu0 0.0
  %11624 = vmatmul.mubr.f32.gmra.mrb[0].mxu0 %v11353
  %v11625 = vpop.f32.mrb[0].mxu0
  %v11626 = vadd.f32 0.0, %v11625
  %v11627 = vpop.f32.mrb[0].mxu0
  %11628 = vmatprep.mubr.f32.mxu0 0.0
  %11629 = vmatmul.mubr.f32.gmra.mrb[0].mxu0 %v11356
  %v11630 = vpop.f32.mrb[0].mxu0
  %v11631 = vadd.f32 0.0, %v11630
  %v11632 = vpop.f32.mrb[0].mxu0
  %11633 = vmatprep.mubr.f32.mxu0 0.0
  %11634 = vmatmul.mubr.f32.gmra.mrb[0].mxu0 %v11359
  %v11635 = vpop.f32.mrb[0].mxu0
  %v11636 = vadd.f32 0.0, %v11635
  %v11637 = vpop.f32.mrb[0].mxu0
  %11638 = vmatprep.mubr.f32.mxu0 0.0
  %11639 = vmatmul.mubr.f32.gmra.mrb[0].mxu0 %v11362
  %v11640 = vpop.f32.mrb[0].mxu0
  %v11641 = vadd.f32 0.0, %v11640
  %v11642 = vpop.f32.mrb[0].mxu0
  %11643 = vmatprep.mubr.f32.mxu0 0.0
  %11644 = vmatmul.mubr.f32.gmra.mrb[0].mxu0 %v11365
  %v11645 = vpop.f32.mrb[0].mxu0
  %v11646 = vadd.f32 0.0, %v11645
  %v11647 = vpop.f32.mrb[0].mxu0
  %11648 = vmatprep.mubr.f32.mxu0 0.0
  %11649 = vmatmul.mubr.f32.gmra.mrb[0].mxu0 %v11368
  %v11650 = vpop.f32.mrb[0].mxu0
  %v11651 = vadd.f32 0.0, %v11650
  %v11652 = vpop.f32.mrb[0].mxu0
  %11653 = vmatprep.mubr.f32.mxu0 0.0
  %11654 = vmatmul.mubr.f32.gmra.mrb[0].mxu0 %v11371
  %v11655 = vpop.f32.mrb[0].mxu0
  %v11656 = vadd.f32 0.0, %v11655
  %v11657 = vpop.f32.mrb[0].mxu0
  %11658 = vmatprep.mubr.f32.mxu0 0.0
  %11659 = vmatmul.mubr.f32.gmra.mrb[0].mxu0 %v11374
  %v11660 = vpop.f32.mrb[0].mxu0
  %v11661 = vadd.f32 0.0, %v11660
  %v11662 = vpop.f32.mrb[0].mxu0
  %11663 = vmatprep.mubr.f32.mxu0 0.0
  %11664 = vmatmul.mubr.f32.gmra.mrb[0].mxu0 %v11377
  %v11665 = vpop.f32.mrb[0].mxu0
  %v11666 = vadd.f32 0.0, %v11665
  %v11667 = vpop.f32.mrb[0].mxu0
  %11668 = vmatprep.mubr.f32.mxu0 0.0
  %11669 = vmatmul.mubr.f32.gmra.mrb[0].mxu0 %v11380
  %v11670 = vpop.f32.mrb[0].mxu0
  %v11671 = vadd.f32 0.0, %v11670
  %v11672 = vpop.f32.mrb[0].mxu0
  %11673 = vmatprep.mubr.f32.mxu0 0.0
  %11674 = vmatmul.mubr.f32.gmra.mrb[0].mxu0 %v11383
  %v11675 = vpop.f32.mrb[0].mxu0
  %v11676 = vadd.f32 0.0, %v11675
  %v11677 = vpop.f32.mrb[0].mxu0
  %11678 = vmatprep.mubr.f32.mxu0 0.0
  %11679 = vmatmul.mubr.f32.gmra.mrb[0].mxu0 %v11386
  %v11680 = vpop.f32.mrb[0].mxu0
  %v11681 = vadd.f32 0.0, %v11680
  %v11682 = vpop.f32.mrb[0].mxu0
  %11683 = vmatprep.mubr.f32.mxu0 0.0
  %11684 = vmatmul.mubr.f32.gmra.mrb[0].mxu0 %v11389
  %v11685 = vpop.f32.mrb[0].mxu0
  %v11686 = vadd.f32 0.0, %v11685
  %v11687 = vpop.f32.mrb[0].mxu0
  %11688 = vmatprep.mubr.f32.mxu0 0.0
  %11689 = vmatmul.mubr.f32.gmra.mrb[0].mxu0 %v11392
  %v11690 = vpop.f32.mrb[0].mxu0
  %v11691 = vadd.f32 0.0, %v11690
  %v11692 = vpop.f32.mrb[0].mxu0
  %11693 = vmatprep.mubr.f32.mxu0 0.0
  %11694 = vmatmul.mubr.f32.gmra.mrb[0].mxu0 %v11395
  %v11695 = vpop.f32.mrb[0].mxu0
  %v11696 = vadd.f32 0.0, %v11695
  %v11697 = vpop.f32.mrb[0].mxu0
  %11698 = vmatprep.mubr.f32.mxu0 0.0
  %11699 = vmatmul.mubr.f32.gmra.mrb[0].mxu0 %v11398
  %v11700 = vpop.f32.mrb[0].mxu0
  %v11701 = vadd.f32 0.0, %v11700
  %v11702 = vpop.f32.mrb[0].mxu0
  %11703 = vmatprep.mubr.f32.mxu0 0.0
  %11704 = vmatmul.mubr.f32.gmra.mrb[0].mxu0 %v11401
  %v11705 = vpop.f32.mrb[0].mxu0
  %v11706 = vadd.f32 0.0, %v11705
  %v11707 = vpop.f32.mrb[0].mxu0
  %11708 = vmatprep.mubr.f32.mxu0 0.0
  %11709 = vmatmul.mubr.f32.gmra.mrb[0].mxu0 %v11404
  %v11710 = vpop.f32.mrb[0].mxu0
  %v11711 = vadd.f32 0.0, %v11710
  %v11712 = vpop.f32.mrb[0].mxu0
  %11713 = vmatprep.mubr.f32.mxu0 0.0
  %11714 = vmatmul.mubr.f32.gmra.mrb[0].mxu0 %v11407
  %v11715 = vpop.f32.mrb[0].mxu0
  %v11716 = vadd.f32 0.0, %v11715
  %v11717 = vpop.f32.mrb[0].mxu0
  %11718 = vmatprep.mubr.f32.mxu0 0.0
  %11719 = vmatmul.mubr.f32.gmra.mrb[0].mxu0 %v11410
  %v11720 = vpop.f32.mrb[0].mxu0
  %v11721 = vadd.f32 0.0, %v11720
  %v11722 = vpop.f32.mrb[0].mxu0
  %11723 = vmatprep.mubr.f32.mxu0 0.0
  %11724 = vmatmul.mubr.f32.gmra.mrb[0].mxu0 %v11413
  %v11725 = vpop.f32.mrb[0].mxu0
  %v11726 = vadd.f32 0.0, %v11725
  %v11727 = vpop.f32.mrb[0].mxu0
  %11728 = vmatprep.mubr.f32.mxu0 0.0
  %11729 = vmatmul.mubr.f32.gmra.mrb[0].mxu0 %v11416
  %v11730 = vpop.f32.mrb[0].mxu0
  %v11731 = vadd.f32 0.0, %v11730
  %v11732 = vpop.f32.mrb[0].mxu0
  %11733 = vmatprep.mubr.f32.mxu0 0.0
  %11734 = vmatmul.mubr.f32.gmra.mrb[0].mxu0 %v11419
  %v11735 = vpop.f32.mrb[0].mxu0
  %v11736 = vadd.f32 0.0, %v11735
  %v11737 = vpop.f32.mrb[0].mxu0
  %11738 = vmatprep.mubr.f32.mxu0 0.0
  %11739 = vmatmul.mubr.f32.gmra.mrb[0].mxu0 %v11422
  %v11740 = vpop.f32.mrb[0].mxu0
  %v11741 = vadd.f32 0.0, %v11740
  %v11742 = vpop.f32.mrb[0].mxu0
  %11743 = vmatprep.mubr.f32.mxu0 0.0
  %11744 = vmatmul.mubr.f32.gmra.mrb[0].mxu0 %v11425
  %v11745 = vpop.f32.mrb[0].mxu0
  %v11746 = vadd.f32 0.0, %v11745
  %v11747 = vpop.f32.mrb[0].mxu0
  %11748 = vmatprep.mubr.f32.mxu0 0.0
  %11749 = vmatmul.mubr.f32.gmra.mrb[0].mxu0 %v11428
  %v11750 = vpop.f32.mrb[0].mxu0
  %v11751 = vadd.f32 0.0, %v11750
  %v11752 = vpop.f32.mrb[0].mxu0
  %11753 = vmatprep.mubr.f32.mxu0 0.0
  %11754 = vmatmul.mubr.f32.gmra.mrb[0].mxu0 %v11431
  %v11755 = vpop.f32.mrb[0].mxu0
  %v11756 = vadd.f32 0.0, %v11755
  %v11757 = vpop.f32.mrb[0].mxu0
  %11758 = vmatprep.mubr.f32.mxu0 0.0
  %11759 = vmatmul.mubr.f32.gmra.mrb[0].mxu0 %v11434
  %v11760 = vpop.f32.mrb[0].mxu0
  %v11761 = vadd.f32 0.0, %v11760
  %v11762 = vpop.f32.mrb[0].mxu0
  %11763 = vmatprep.mubr.f32.mxu0 0.0
  %11764 = vmatmul.mubr.f32.gmra.mrb[0].mxu0 %v11437
  %v11765 = vpop.f32.mrb[0].mxu0
  %v11766 = vadd.f32 0.0, %v11765
  %v11767 = vpop.f32.mrb[0].mxu0
  %11768 = vmatprep.mubr.f32.mxu0 0.0
  %11769 = vmatmul.mubr.f32.gmra.mrb[0].mxu0 %v11440
  %v11770 = vpop.f32.mrb[0].mxu0
  %v11771 = vadd.f32 0.0, %v11770
  %v11772 = vpop.f32.mrb[0].mxu0
  %11773 = vmatprep.mubr.f32.mxu0 0.0
  %11774 = vmatmul.mubr.f32.gmra.mrb[0].mxu0 %v11443
  %v11775 = vpop.f32.mrb[0].mxu0
  %v11776 = vadd.f32 0.0, %v11775
  %v11777 = vpop.f32.mrb[0].mxu0
  %11778 = vmatprep.mubr.f32.mxu0 0.0
  %11779 = vmatmul.mubr.f32.gmra.mrb[0].mxu0 %v11446
  %v11780 = vpop.f32.mrb[0].mxu0
  %v11781 = vadd.f32 0.0, %v11780
  %v11782 = vpop.f32.mrb[0].mxu0
  %11783 = vmatprep.mubr.f32.mxu0 0.0
  %11784 = vmatmul.mubr.f32.gmra.mrb[0].mxu0 %v11449
  %v11785 = vpop.f32.mrb[0].mxu0
  %v11786 = vadd.f32 0.0, %v11785
  %v11787 = vpop.f32.mrb[0].mxu0
  %11788 = vmatprep.mubr.f32.mxu0 0.0
  %11789 = vmatmul.mubr.f32.gmra.mrb[0].mxu0 %v11452
  %v11790 = vpop.f32.mrb[0].mxu0
  %v11791 = vadd.f32 0.0, %v11790
  %v11792 = vpop.f32.mrb[0].mxu0
  %11793 = vmatprep.mubr.f32.mxu0 0.0
  %11794 = vmatmul.mubr.f32.gmra.mrb[0].mxu0 %v11455
  %v11795 = vpop.f32.mrb[0].mxu0
  %v11796 = vadd.f32 0.0, %v11795
  %v11797 = vpop.f32.mrb[0].mxu0
  %11798 = vmatprep.mubr.f32.mxu0 0.0
  %11799 = vmatmul.mubr.f32.gmra.mrb[0].mxu0 %v11458
  %v11800 = vpop.f32.mrb[0].mxu0
  %v11801 = vadd.f32 0.0, %v11800
  %v11802 = vpop.f32.mrb[0].mxu0
  %11803 = vmatprep.mubr.f32.mxu0 0.0
  %11804 = vmatmul.mubr.f32.gmra.mrb[0].mxu0 %v11461
  %v11805 = vpop.f32.mrb[0].mxu0
  %v11806 = vadd.f32 0.0, %v11805
  %v11807 = vpop.f32.mrb[0].mxu0
  %11808 = vmatprep.mubr.f32.mxu0 0.0
  %11809 = vmatmul.mubr.f32.gmra.mrb[0].mxu0 %v11464
  %v11810 = vpop.f32.mrb[0].mxu0
  %v11811 = vadd.f32 0.0, %v11810
  %v11812 = vpop.f32.mrb[0].mxu0
  %11813 = vmatprep.mubr.f32.mxu0 0.0
  %11814 = vmatmul.mubr.f32.gmra.mrb[0].mxu0 %v11467
  %v11815 = vpop.f32.mrb[0].mxu0
  %v11816 = vadd.f32 0.0, %v11815
  %v11817 = vpop.f32.mrb[0].mxu0
  %11818 = vmatprep.mubr.f32.mxu0 0.0
  %11819 = vmatmul.mubr.f32.gmra.mrb[0].mxu0 %v11470
  %v11820 = vpop.f32.mrb[0].mxu0
  %v11821 = vadd.f32 0.0, %v11820
  %v11822 = vpop.f32.mrb[0].mxu0
  %11823 = vmatprep.mubr.f32.mxu0 0.0
  %11824 = vmatmul.mubr.f32.gmra.mrb[0].mxu0 %v11473
  %v11825 = vpop.f32.mrb[0].mxu0
  %v11826 = vadd.f32 0.0, %v11825
  %v11827 = vpop.f32.mrb[0].mxu0
  %11828 = vmatprep.mubr.f32.mxu0 0.0
  %11829 = vmatmul.mubr.f32.gmra.mrb[0].mxu0 %v11476
  %v11830 = vpop.f32.mrb[0].mxu0
  %v11831 = vadd.f32 0.0, %v11830
  %v11832 = vpop.f32.mrb[0].mxu0
  %11833 = vmatprep.mubr.f32.mxu0 0.0
  %11834 = vmatmul.mubr.f32.gmra.mrb[0].mxu0 %v11479
  %v11835 = vpop.f32.mrb[0].mxu0
  %v11836 = vadd.f32 0.0, %v11835
  %v11837 = vpop.f32.mrb[0].mxu0
  %11838 = vmatprep.mubr.f32.mxu0 0.0
  %11839 = vmatmul.mubr.f32.gmra.mrb[0].mxu0 %v11482
  %v11840 = vpop.f32.mrb[0].mxu0
  %v11841 = vadd.f32 0.0, %v11840
  %v11842 = vpop.f32.mrb[0].mxu0
  %11843 = vmatprep.mubr.f32.mxu0 0.0
  %11844 = vmatmul.mubr.f32.gmra.mrb[0].mxu0 %v11485
  %v11845 = vpop.f32.mrb[0].mxu0
  %v11846 = vadd.f32 0.0, %v11845
  %v11847 = vpop.f32.mrb[0].mxu0
  %11848 = vmatprep.mubr.f32.mxu0 0.0
  %11849 = vmatmul.mubr.f32.gmra.mrb[0].mxu0 %v11488
  %v11850 = vpop.f32.mrb[0].mxu0
  %v11851 = vadd.f32 0.0, %v11850
  %v11852 = vpop.f32.mrb[0].mxu0
  %11853 = vmatprep.mubr.f32.mxu0 0.0
  %11854 = vmatmul.mubr.f32.gmra.mrb[0].mxu0 %v11491
  %v11855 = vpop.f32.mrb[0].mxu0
  %v11856 = vadd.f32 0.0, %v11855
  %v11857 = vpop.f32.mrb[0].mxu0
  %11858 = vmatprep.mubr.f32.mxu0 0.0
  %11859 = vmatmul.mubr.f32.gmra.mrb[0].mxu0 %v11494
  %v11860 = vpop.f32.mrb[0].mxu0
  %v11861 = vadd.f32 0.0, %v11860
  %v11862 = vpop.f32.mrb[0].mxu0
  %11863 = vmatprep.mubr.f32.mxu0 0.0
  %11864 = vmatmul.mubr.f32.gmra.mrb[0].mxu0 %v11497
  %v11865 = vpop.f32.mrb[0].mxu0
  %v11866 = vadd.f32 0.0, %v11865
  %v11867 = vpop.f32.mrb[0].mxu0
  %11868 = vmatprep.mubr.f32.mxu0 0.0
  %11869 = vmatmul.mubr.f32.gmra.mrb[0].mxu0 %v11500
  %v11870 = vpop.f32.mrb[0].mxu0
  %v11871 = vadd.f32 0.0, %v11870
  %v11872 = vpop.f32.mrb[0].mxu0
  %11873 = vmatprep.mubr.f32.mxu0 0.0
  %11874 = vmatmul.mubr.f32.gmra.mrb[0].mxu0 %v11503
  %v11875 = vpop.f32.mrb[0].mxu0
  %v11876 = vadd.f32 0.0, %v11875
  %v11877 = vpop.f32.mrb[0].mxu0
  %11878 = vmatprep.mubr.f32.mxu0 0.0
  %11879 = vmatmul.mubr.f32.gmra.mrb[0].mxu0 %v11506
  %v11880 = vpop.f32.mrb[0].mxu0
  %v11881 = vadd.f32 0.0, %v11880
  %v11882 = vpop.f32.mrb[0].mxu0
  %11883 = vmatprep.mubr.f32.mxu0 0.0
  %11884 = vmatmul.mubr.f32.gmra.mrb[0].mxu0 %v11509
  %v11885 = vpop.f32.mrb[0].mxu0
  %v11886 = vadd.f32 0.0, %v11885
  %v11887 = vpop.f32.mrb[0].mxu0
  %11888 = vmatprep.mubr.f32.mxu0 0.0
  %11889 = vmatmul.mubr.f32.gmra.mrb[0].mxu0 %v11512
  %v11890 = vpop.f32.mrb[0].mxu0
  %v11891 = vadd.f32 0.0, %v11890
  %v11892 = vpop.f32.mrb[0].mxu0
  %11893 = vmatprep.mubr.f32.mxu0 0.0
  %11894 = vmatmul.mubr.f32.gmra.mrb[0].mxu0 %v11515
  %v11895 = vpop.f32.mrb[0].mxu0
  %v11896 = vadd.f32 0.0, %v11895
  %v11897 = vpop.f32.mrb[0].mxu0
  %11898 = vmatprep.mubr.f32.mxu0 0.0
  %11899 = vmatmul.mubr.f32.gmra.mrb[0].mxu0 %v11518
  %v11900 = vpop.f32.mrb[0].mxu0
  %v11901 = vadd.f32 0.0, %v11900
  %v11902 = vpop.f32.mrb[0].mxu0
  %11903 = vmatprep.mubr.f32.mxu0 0.0
  %11904 = vmatmul.mubr.f32.gmra.mrb[0].mxu0 %v11521
  %v11905 = vpop.f32.mrb[0].mxu0
  %v11906 = vadd.f32 0.0, %v11905
  %v11907 = vpop.f32.mrb[0].mxu0
  %11908 = vmatprep.mubr.f32.mxu0 0.0
  %11909 = vmatmul.mubr.f32.gmra.mrb[0].mxu0 %v11524
  %v11910 = vpop.f32.mrb[0].mxu0
  %v11911 = vadd.f32 0.0, %v11910
  %v11912 = vpop.f32.mrb[0].mxu0
  %11913 = vdwg.mxu0
  %v11914 = vadd.f32 %v11204, %v11596
  %v11915 = vadd.f32 %v11205, %v11601
  %v11916 = vadd.f32 %v11206, %v11606
  %v11917 = vadd.f32 %v11207, %v11611
  %v11918 = vadd.f32 %v11208, %v11616
  %v11919 = vadd.f32 %v11209, %v11621
  %v11920 = vadd.f32 %v11210, %v11626
  %v11921 = vadd.f32 %v11211, %v11631
  %v11922 = vadd.f32 %v11212, %v11636
  %v11923 = vadd.f32 %v11213, %v11641
  %v11924 = vadd.f32 %v11214, %v11646
  %v11925 = vadd.f32 %v11215, %v11651
  %v11926 = vadd.f32 %v11216, %v11656
  %v11927 = vadd.f32 %v11217, %v11661
  %v11928 = vadd.f32 %v11218, %v11666
  %v11929 = vadd.f32 %v11219, %v11671
  %v11930 = vadd.f32 %v11220, %v11676
  %v11931 = vadd.f32 %v11221, %v11681
  %v11932 = vadd.f32 %v11222, %v11686
  %v11933 = vadd.f32 %v11223, %v11691
  %v11934 = vadd.f32 %v11224, %v11696
  %v11935 = vadd.f32 %v11225, %v11701
  %v11936 = vadd.f32 %v11226, %v11706
  %v11937 = vadd.f32 %v11227, %v11711
  %v11938 = vadd.f32 %v11228, %v11716
  %v11939 = vadd.f32 %v11229, %v11721
  %v11940 = vadd.f32 %v11230, %v11726
  %v11941 = vadd.f32 %v11231, %v11731
  %v11942 = vadd.f32 %v11232, %v11736
  %v11943 = vadd.f32 %v11233, %v11741
  %v11944 = vadd.f32 %v11234, %v11746
  %v11945 = vadd.f32 %v11235, %v11751
  %v11946 = vadd.f32 %v11236, %v11756
  %v11947 = vadd.f32 %v11237, %v11761
  %v11948 = vadd.f32 %v11238, %v11766
  %v11949 = vadd.f32 %v11239, %v11771
  %v11950 = vadd.f32 %v11240, %v11776
  %v11951 = vadd.f32 %v11241, %v11781
  %v11952 = vadd.f32 %v11242, %v11786
  %v11953 = vadd.f32 %v11243, %v11791
  %v11954 = vadd.f32 %v11244, %v11796
  %v11955 = vadd.f32 %v11245, %v11801
  %v11956 = vadd.f32 %v11246, %v11806
  %v11957 = vadd.f32 %v11247, %v11811
  %v11958 = vadd.f32 %v11248, %v11816
  %v11959 = vadd.f32 %v11249, %v11821
  %v11960 = vadd.f32 %v11250, %v11826
  %v11961 = vadd.f32 %v11251, %v11831
  %v11962 = vadd.f32 %v11252, %v11836
  %v11963 = vadd.f32 %v11253, %v11841
  %v11964 = vadd.f32 %v11254, %v11846
  %v11965 = vadd.f32 %v11255, %v11851
  %v11966 = vadd.f32 %v11256, %v11856
  %v11967 = vadd.f32 %v11257, %v11861
  %v11968 = vadd.f32 %v11258, %v11866
  %v11969 = vadd.f32 %v11259, %v11871
  %v11970 = vadd.f32 %v11260, %v11876
  %v11971 = vadd.f32 %v11261, %v11881
  %v11972 = vadd.f32 %v11262, %v11886
  %v11973 = vadd.f32 %v11263, %v11891
  %v11974 = vadd.f32 %v11264, %v11896
  %v11975 = vadd.f32 %v11265, %v11901
  %v11976 = vadd.f32 %v11266, %v11906
  %v11977 = vadd.f32 %v11267, %v11911
  %v11978 = vld [vmem:[%s4397 + $0x1] sm:$0xff]
  %v11979 = vld [vmem:[%s4397 + $0x9] sm:$0xff]
  %v11980 = vld [vmem:[%s4397 + $0x19] sm:$0xff]
  %v11981 = vld [vmem:[%s4397 + $0x21] sm:$0xff]
  %v11982 = vld [vmem:[%s4397 + $0x31] sm:$0xff]
  %v11983 = vld [vmem:[%s4397 + $0x39] sm:$0xff]
  %v11984 = vld [vmem:[%s4397 + $0x49] sm:$0xff]
  %v11985 = vld [vmem:[%s4397 + $0x51] sm:$0xff]
  %v11986 = vld [vmem:[%s4397 + $0x61] sm:$0xff]
  %v11987 = vld [vmem:[%s4397 + $0x69] sm:$0xff]
  %v11988 = vld [vmem:[%s4397 + $0x79] sm:$0xff]
  %v11989 = vld [vmem:[%s4397 + $0x81] sm:$0xff]
  %v11990 = vld [vmem:[%s4397 + $0x91] sm:$0xff]
  %v11991 = vld [vmem:[%s4397 + $0x99] sm:$0xff]
  %v11992 = vld [vmem:[%s4397 + $0xa9] sm:$0xff]
  %v11993 = vld [vmem:[%s4397 + $0xb1] sm:$0xff]
  %v11994 = vld [vmem:[%s4397 + $0xc1] sm:$0xff]
  %v11995 = vld [vmem:[%s4397 + $0xc9] sm:$0xff]
  %v11996 = vld [vmem:[%s4397 + $0xd9] sm:$0xff]
  %v11997 = vld [vmem:[%s4397 + $0xe1] sm:$0xff]
  %v11998 = vld [vmem:[%s4397 + $0xf1] sm:$0xff]
  %v11999 = vld [vmem:[%s4397 + $0xf9] sm:$0xff]
  %v12000 = vld [vmem:[%s4397 + $0x109] sm:$0xff]
  %v12001 = vld [vmem:[%s4397 + $0x111] sm:$0xff]
  %v12002 = vld [vmem:[%s4397 + $0x121] sm:$0xff]
  %v12003 = vld [vmem:[%s4397 + $0x129] sm:$0xff]
  %v12004 = vld [vmem:[%s4397 + $0x139] sm:$0xff]
  %v12005 = vld [vmem:[%s4397 + $0x141] sm:$0xff]
  %v12006 = vld [vmem:[%s4397 + $0x151] sm:$0xff]
  %v12007 = vld [vmem:[%s4397 + $0x159] sm:$0xff]
  %v12008 = vld [vmem:[%s4397 + $0x169] sm:$0xff]
  %v12009 = vld [vmem:[%s4397 + $0x171] sm:$0xff]
  %v12010 = vld [vmem:[%s4397 + $0x1b1] sm:$0xff]
  %v12011 = vld [vmem:[%s4397 + $0x1b9] sm:$0xff]
  %v12012 = vld [vmem:[%s4397 + $0x1c9] sm:$0xff]
  %v12013 = vld [vmem:[%s4397 + $0x1d1] sm:$0xff]
  %v12014 = vld [vmem:[%s4397 + $0x1e1] sm:$0xff]
  %v12015 = vld [vmem:[%s4397 + $0x1e9] sm:$0xff]
  %v12016 = vld [vmem:[%s4397 + $0x1f9] sm:$0xff]
  %v12017 = vld [vmem:[%s4397 + $0x201] sm:$0xff]
  %v12018 = vld [vmem:[%s4397 + $0x211] sm:$0xff]
  %v12019 = vld [vmem:[%s4397 + $0x219] sm:$0xff]
  %v12020 = vld [vmem:[%s4397 + $0x229] sm:$0xff]
  %v12021 = vld [vmem:[%s4397 + $0x231] sm:$0xff]
  %v12022 = vld [vmem:[%s4397 + $0x241] sm:$0xff]
  %v12023 = vld [vmem:[%s4397 + $0x249] sm:$0xff]
  %v12024 = vld [vmem:[%s4397 + $0x259] sm:$0xff]
  %v12025 = vld [vmem:[%s4397 + $0x261] sm:$0xff]
  %v12026 = vld [vmem:[%s4397 + $0x271] sm:$0xff]
  %v12027 = vld [vmem:[%s4397 + $0x279] sm:$0xff]
  %v12028 = vld [vmem:[%s4397 + $0x289] sm:$0xff]
  %v12029 = vld [vmem:[%s4397 + $0x291] sm:$0xff]
  %v12030 = vld [vmem:[%s4397 + $0x2a1] sm:$0xff]
  %v12031 = vld [vmem:[%s4397 + $0x2a9] sm:$0xff]
  %v12032 = vld [vmem:[%s4397 + $0x2b9] sm:$0xff]
  %v12033 = vld [vmem:[%s4397 + $0x2c1] sm:$0xff]
  %v12034 = vld [vmem:[%s4397 + $0x2d1] sm:$0xff]
  %v12035 = vld [vmem:[%s4397 + $0x2d9] sm:$0xff]
  %v12036 = vld [vmem:[%s4397 + $0x2e9] sm:$0xff]
  %v12037 = vld [vmem:[%s4397 + $0x2f1] sm:$0xff]
  %v12038 = vld [vmem:[%s4397 + $0x301] sm:$0xff]
  %v12039 = vld [vmem:[%s4397 + $0x309] sm:$0xff]
  %v12040 = vld [vmem:[%s4397 + $0x319] sm:$0xff]
  %v12041 = vld [vmem:[%s4397 + $0x321] sm:$0xff]
  %s12042 = scalar_lea.vmem %s4, 28
  %v12043 = vld [vmem:[%s12042] sm:$0xf]
  %v12045 = vsel %vm26, %v11978, 0
  %v12048 = vsel %vm26, %v11979, 0
  %v12051 = vsel %vm26, %v11980, 0
  %v12054 = vsel %vm26, %v11981, 0
  %v12057 = vsel %vm26, %v11982, 0
  %v12060 = vsel %vm26, %v11983, 0
  %v12063 = vsel %vm26, %v11984, 0
  %v12066 = vsel %vm26, %v11985, 0
  %v12069 = vsel %vm26, %v11986, 0
  %v12072 = vsel %vm26, %v11987, 0
  %v12075 = vsel %vm26, %v11988, 0
  %v12078 = vsel %vm26, %v11989, 0
  %v12081 = vsel %vm26, %v11990, 0
  %v12084 = vsel %vm26, %v11991, 0
  %v12087 = vsel %vm26, %v11992, 0
  %v12090 = vsel %vm26, %v11993, 0
  %v12093 = vsel %vm26, %v11994, 0
  %v12096 = vsel %vm26, %v11995, 0
  %v12099 = vsel %vm26, %v11996, 0
  %v12102 = vsel %vm26, %v11997, 0
  %v12105 = vsel %vm26, %v11998, 0
  %v12108 = vsel %vm26, %v11999, 0
  %v12111 = vsel %vm26, %v12000, 0
  %v12114 = vsel %vm26, %v12001, 0
  %v12117 = vsel %vm26, %v12002, 0
  %v12120 = vsel %vm26, %v12003, 0
  %v12123 = vsel %vm26, %v12004, 0
  %v12126 = vsel %vm26, %v12005, 0
  %v12129 = vsel %vm26, %v12006, 0
  %v12132 = vsel %vm26, %v12007, 0
  %v12135 = vsel %vm26, %v12008, 0
  %v12138 = vsel %vm26, %v12009, 0
  %v12141 = vsel %vm26, %v12010, 0
  %v12144 = vsel %vm26, %v12011, 0
  %v12147 = vsel %vm26, %v12012, 0
  %v12150 = vsel %vm26, %v12013, 0
  %v12153 = vsel %vm26, %v12014, 0
  %v12156 = vsel %vm26, %v12015, 0
  %v12159 = vsel %vm26, %v12016, 0
  %v12162 = vsel %vm26, %v12017, 0
  %v12165 = vsel %vm26, %v12018, 0
  %v12168 = vsel %vm26, %v12019, 0
  %v12171 = vsel %vm26, %v12020, 0
  %v12174 = vsel %vm26, %v12021, 0
  %v12177 = vsel %vm26, %v12022, 0
  %v12180 = vsel %vm26, %v12023, 0
  %v12183 = vsel %vm26, %v12024, 0
  %v12186 = vsel %vm26, %v12025, 0
  %v12189 = vsel %vm26, %v12026, 0
  %v12192 = vsel %vm26, %v12027, 0
  %v12195 = vsel %vm26, %v12028, 0
  %v12198 = vsel %vm26, %v12029, 0
  %v12201 = vsel %vm26, %v12030, 0
  %v12204 = vsel %vm26, %v12031, 0
  %v12207 = vsel %vm26, %v12032, 0
  %v12210 = vsel %vm26, %v12033, 0
  %v12213 = vsel %vm26, %v12034, 0
  %v12216 = vsel %vm26, %v12035, 0
  %v12219 = vsel %vm26, %v12036, 0
  %v12222 = vsel %vm26, %v12037, 0
  %v12225 = vsel %vm26, %v12038, 0
  %v12228 = vsel %vm26, %v12039, 0
  %v12231 = vsel %vm26, %v12040, 0
  %v12234 = vsel %vm26, %v12041, 0
  %v12237 = vsel %vm588, %v12043, 0
  %12239 = vmatprep.subr.mxu0 0.0
  %12240 = vmatpush1.msra.mxu0 %v12237
  %12241 = vmatprep.subr.mxu0 0.0
  %12242 = vmatpush1.msra.mxu0 0.0
  %12243 = vmatprep.subr.mxu0 0.0
  %12244 = vmatpush1.msra.mxu0 0.0
  %12245 = vmatprep.subr.mxu0 0.0
  %12246 = vmatpush1.msra.mxu0 0.0
  %12247 = vmatprep.subr.mxu0 0.0
  %12248 = vmatpush1.msra.mxu0 0.0
  %12249 = vmatprep.subr.mxu0 0.0
  %12250 = vmatpush1.msra.mxu0 0.0
  %12251 = vmatprep.subr.mxu0 0.0
  %12252 = vmatpush1.msra.mxu0 0.0
  %12253 = vmatprep.subr.mxu0 0.0
  %12254 = vmatpush1.msra.mxu0 0.0
  %12255 = vmatprep.subr.mxu0 0.0
  %12256 = vmatpush1.msra.mxu0 0.0
  %12257 = vmatprep.subr.mxu0 0.0
  %12258 = vmatpush1.msra.mxu0 0.0
  %12259 = vmatprep.subr.mxu0 0.0
  %12260 = vmatpush1.msra.mxu0 0.0
  %12261 = vmatprep.subr.mxu0 0.0
  %12262 = vmatpush1.msra.mxu0 0.0
  %12263 = vmatprep.subr.mxu0 0.0
  %12264 = vmatpush1.msra.mxu0 0.0
  %12265 = vmatprep.subr.mxu0 0.0
  %12266 = vmatpush1.msra.mxu0 0.0
  %12267 = vmatprep.subr.mxu0 0.0
  %12268 = vmatpush1.msra.mxu0 0.0
  %12269 = vmatprep.subr.mxu0 0.0
  %12270 = vmatpush1.msra.mxu0 0.0
  %12271 = vmatprep.subr.mxu0 0.0
  %12272 = vmatpush1.msra.mxu0 0.0
  %12273 = vmatprep.subr.mxu0 0.0
  %12274 = vmatpush1.msra.mxu0 0.0
  %12275 = vmatprep.subr.mxu0 0.0
  %12276 = vmatpush1.msra.mxu0 0.0
  %12277 = vmatprep.subr.mxu0 0.0
  %12278 = vmatpush1.msra.mxu0 0.0
  %12279 = vmatprep.subr.mxu0 0.0
  %12280 = vmatpush1.msra.mxu0 0.0
  %12281 = vmatprep.subr.mxu0 0.0
  %12282 = vmatpush1.msra.mxu0 0.0
  %12283 = vmatprep.subr.mxu0 0.0
  %12284 = vmatpush1.msra.mxu0 0.0
  %12285 = vmatprep.subr.mxu0 0.0
  %12286 = vmatpush1.msra.mxu0 0.0
  %12287 = vmatprep.subr.mxu0 0.0
  %12288 = vmatpush1.msra.mxu0 0.0
  %12289 = vmatprep.subr.mxu0 0.0
  %12290 = vmatpush1.msra.mxu0 0.0
  %12291 = vmatprep.subr.mxu0 0.0
  %12292 = vmatpush1.msra.mxu0 0.0
  %12293 = vmatprep.subr.mxu0 0.0
  %12294 = vmatpush1.msra.mxu0 0.0
  %12295 = vmatprep.subr.mxu0 0.0
  %12296 = vmatpush1.msra.mxu0 0.0
  %12297 = vmatprep.subr.mxu0 0.0
  %12298 = vmatpush1.msra.mxu0 0.0
  %12299 = vmatprep.subr.mxu0 0.0
  %12300 = vmatpush1.msra.mxu0 0.0
  %12301 = vmatprep.subr.mxu0 0.0
  %12302 = vmatpush1.msra.mxu0 0.0
  %12303 = vmatprep.mubr.f32.mxu0 0.0
  %12304 = vmatmul.mubr.f32.gmra.mrb[0].mxu0 %v12045
  %v12305 = vpop.f32.mrb[0].mxu0
  %v12306 = vadd.f32 0.0, %v12305
  %v12307 = vpop.f32.mrb[0].mxu0
  %12308 = vmatprep.mubr.f32.mxu0 0.0
  %12309 = vmatmul.mubr.f32.gmra.mrb[0].mxu0 %v12048
  %v12310 = vpop.f32.mrb[0].mxu0
  %v12311 = vadd.f32 0.0, %v12310
  %v12312 = vpop.f32.mrb[0].mxu0
  %12313 = vmatprep.mubr.f32.mxu0 0.0
  %12314 = vmatmul.mubr.f32.gmra.mrb[0].mxu0 %v12051
  %v12315 = vpop.f32.mrb[0].mxu0
  %v12316 = vadd.f32 0.0, %v12315
  %v12317 = vpop.f32.mrb[0].mxu0
  %12318 = vmatprep.mubr.f32.mxu0 0.0
  %12319 = vmatmul.mubr.f32.gmra.mrb[0].mxu0 %v12054
  %v12320 = vpop.f32.mrb[0].mxu0
  %v12321 = vadd.f32 0.0, %v12320
  %v12322 = vpop.f32.mrb[0].mxu0
  %12323 = vmatprep.mubr.f32.mxu0 0.0
  %12324 = vmatmul.mubr.f32.gmra.mrb[0].mxu0 %v12057
  %v12325 = vpop.f32.mrb[0].mxu0
  %v12326 = vadd.f32 0.0, %v12325
  %v12327 = vpop.f32.mrb[0].mxu0
  %12328 = vmatprep.mubr.f32.mxu0 0.0
  %12329 = vmatmul.mubr.f32.gmra.mrb[0].mxu0 %v12060
  %v12330 = vpop.f32.mrb[0].mxu0
  %v12331 = vadd.f32 0.0, %v12330
  %v12332 = vpop.f32.mrb[0].mxu0
  %12333 = vmatprep.mubr.f32.mxu0 0.0
  %12334 = vmatmul.mubr.f32.gmra.mrb[0].mxu0 %v12063
  %v12335 = vpop.f32.mrb[0].mxu0
  %v12336 = vadd.f32 0.0, %v12335
  %v12337 = vpop.f32.mrb[0].mxu0
  %12338 = vmatprep.mubr.f32.mxu0 0.0
  %12339 = vmatmul.mubr.f32.gmra.mrb[0].mxu0 %v12066
  %v12340 = vpop.f32.mrb[0].mxu0
  %v12341 = vadd.f32 0.0, %v12340
  %v12342 = vpop.f32.mrb[0].mxu0
  %12343 = vmatprep.mubr.f32.mxu0 0.0
  %12344 = vmatmul.mubr.f32.gmra.mrb[0].mxu0 %v12069
  %v12345 = vpop.f32.mrb[0].mxu0
  %v12346 = vadd.f32 0.0, %v12345
  %v12347 = vpop.f32.mrb[0].mxu0
  %12348 = vmatprep.mubr.f32.mxu0 0.0
  %12349 = vmatmul.mubr.f32.gmra.mrb[0].mxu0 %v12072
  %v12350 = vpop.f32.mrb[0].mxu0
  %v12351 = vadd.f32 0.0, %v12350
  %v12352 = vpop.f32.mrb[0].mxu0
  %12353 = vmatprep.mubr.f32.mxu0 0.0
  %12354 = vmatmul.mubr.f32.gmra.mrb[0].mxu0 %v12075
  %v12355 = vpop.f32.mrb[0].mxu0
  %v12356 = vadd.f32 0.0, %v12355
  %v12357 = vpop.f32.mrb[0].mxu0
  %12358 = vmatprep.mubr.f32.mxu0 0.0
  %12359 = vmatmul.mubr.f32.gmra.mrb[0].mxu0 %v12078
  %v12360 = vpop.f32.mrb[0].mxu0
  %v12361 = vadd.f32 0.0, %v12360
  %v12362 = vpop.f32.mrb[0].mxu0
  %12363 = vmatprep.mubr.f32.mxu0 0.0
  %12364 = vmatmul.mubr.f32.gmra.mrb[0].mxu0 %v12081
  %v12365 = vpop.f32.mrb[0].mxu0
  %v12366 = vadd.f32 0.0, %v12365
  %v12367 = vpop.f32.mrb[0].mxu0
  %12368 = vmatprep.mubr.f32.mxu0 0.0
  %12369 = vmatmul.mubr.f32.gmra.mrb[0].mxu0 %v12084
  %v12370 = vpop.f32.mrb[0].mxu0
  %v12371 = vadd.f32 0.0, %v12370
  %v12372 = vpop.f32.mrb[0].mxu0
  %12373 = vmatprep.mubr.f32.mxu0 0.0
  %12374 = vmatmul.mubr.f32.gmra.mrb[0].mxu0 %v12087
  %v12375 = vpop.f32.mrb[0].mxu0
  %v12376 = vadd.f32 0.0, %v12375
  %v12377 = vpop.f32.mrb[0].mxu0
  %12378 = vmatprep.mubr.f32.mxu0 0.0
  %12379 = vmatmul.mubr.f32.gmra.mrb[0].mxu0 %v12090
  %v12380 = vpop.f32.mrb[0].mxu0
  %v12381 = vadd.f32 0.0, %v12380
  %v12382 = vpop.f32.mrb[0].mxu0
  %12383 = vmatprep.mubr.f32.mxu0 0.0
  %12384 = vmatmul.mubr.f32.gmra.mrb[0].mxu0 %v12093
  %v12385 = vpop.f32.mrb[0].mxu0
  %v12386 = vadd.f32 0.0, %v12385
  %v12387 = vpop.f32.mrb[0].mxu0
  %12388 = vmatprep.mubr.f32.mxu0 0.0
  %12389 = vmatmul.mubr.f32.gmra.mrb[0].mxu0 %v12096
  %v12390 = vpop.f32.mrb[0].mxu0
  %v12391 = vadd.f32 0.0, %v12390
  %v12392 = vpop.f32.mrb[0].mxu0
  %12393 = vmatprep.mubr.f32.mxu0 0.0
  %12394 = vmatmul.mubr.f32.gmra.mrb[0].mxu0 %v12099
  %v12395 = vpop.f32.mrb[0].mxu0
  %v12396 = vadd.f32 0.0, %v12395
  %v12397 = vpop.f32.mrb[0].mxu0
  %12398 = vmatprep.mubr.f32.mxu0 0.0
  %12399 = vmatmul.mubr.f32.gmra.mrb[0].mxu0 %v12102
  %v12400 = vpop.f32.mrb[0].mxu0
  %v12401 = vadd.f32 0.0, %v12400
  %v12402 = vpop.f32.mrb[0].mxu0
  %12403 = vmatprep.mubr.f32.mxu0 0.0
  %12404 = vmatmul.mubr.f32.gmra.mrb[0].mxu0 %v12105
  %v12405 = vpop.f32.mrb[0].mxu0
  %v12406 = vadd.f32 0.0, %v12405
  %v12407 = vpop.f32.mrb[0].mxu0
  %12408 = vmatprep.mubr.f32.mxu0 0.0
  %12409 = vmatmul.mubr.f32.gmra.mrb[0].mxu0 %v12108
  %v12410 = vpop.f32.mrb[0].mxu0
  %v12411 = vadd.f32 0.0, %v12410
  %v12412 = vpop.f32.mrb[0].mxu0
  %12413 = vmatprep.mubr.f32.mxu0 0.0
  %12414 = vmatmul.mubr.f32.gmra.mrb[0].mxu0 %v12111
  %v12415 = vpop.f32.mrb[0].mxu0
  %v12416 = vadd.f32 0.0, %v12415
  %v12417 = vpop.f32.mrb[0].mxu0
  %12418 = vmatprep.mubr.f32.mxu0 0.0
  %12419 = vmatmul.mubr.f32.gmra.mrb[0].mxu0 %v12114
  %v12420 = vpop.f32.mrb[0].mxu0
  %v12421 = vadd.f32 0.0, %v12420
  %v12422 = vpop.f32.mrb[0].mxu0
  %12423 = vmatprep.mubr.f32.mxu0 0.0
  %12424 = vmatmul.mubr.f32.gmra.mrb[0].mxu0 %v12117
  %v12425 = vpop.f32.mrb[0].mxu0
  %v12426 = vadd.f32 0.0, %v12425
  %v12427 = vpop.f32.mrb[0].mxu0
  %12428 = vmatprep.mubr.f32.mxu0 0.0
  %12429 = vmatmul.mubr.f32.gmra.mrb[0].mxu0 %v12120
  %v12430 = vpop.f32.mrb[0].mxu0
  %v12431 = vadd.f32 0.0, %v12430
  %v12432 = vpop.f32.mrb[0].mxu0
  %12433 = vmatprep.mubr.f32.mxu0 0.0
  %12434 = vmatmul.mubr.f32.gmra.mrb[0].mxu0 %v12123
  %v12435 = vpop.f32.mrb[0].mxu0
  %v12436 = vadd.f32 0.0, %v12435
  %v12437 = vpop.f32.mrb[0].mxu0
  %12438 = vmatprep.mubr.f32.mxu0 0.0
  %12439 = vmatmul.mubr.f32.gmra.mrb[0].mxu0 %v12126
  %v12440 = vpop.f32.mrb[0].mxu0
  %v12441 = vadd.f32 0.0, %v12440
  %v12442 = vpop.f32.mrb[0].mxu0
  %12443 = vmatprep.mubr.f32.mxu0 0.0
  %12444 = vmatmul.mubr.f32.gmra.mrb[0].mxu0 %v12129
  %v12445 = vpop.f32.mrb[0].mxu0
  %v12446 = vadd.f32 0.0, %v12445
  %v12447 = vpop.f32.mrb[0].mxu0
  %12448 = vmatprep.mubr.f32.mxu0 0.0
  %12449 = vmatmul.mubr.f32.gmra.mrb[0].mxu0 %v12132
  %v12450 = vpop.f32.mrb[0].mxu0
  %v12451 = vadd.f32 0.0, %v12450
  %v12452 = vpop.f32.mrb[0].mxu0
  %12453 = vmatprep.mubr.f32.mxu0 0.0
  %12454 = vmatmul.mubr.f32.gmra.mrb[0].mxu0 %v12135
  %v12455 = vpop.f32.mrb[0].mxu0
  %v12456 = vadd.f32 0.0, %v12455
  %v12457 = vpop.f32.mrb[0].mxu0
  %12458 = vmatprep.mubr.f32.mxu0 0.0
  %12459 = vmatmul.mubr.f32.gmra.mrb[0].mxu0 %v12138
  %v12460 = vpop.f32.mrb[0].mxu0
  %v12461 = vadd.f32 0.0, %v12460
  %v12462 = vpop.f32.mrb[0].mxu0
  %12463 = vmatprep.mubr.f32.mxu0 0.0
  %12464 = vmatmul.mubr.f32.gmra.mrb[0].mxu0 %v12141
  %v12465 = vpop.f32.mrb[0].mxu0
  %v12466 = vadd.f32 0.0, %v12465
  %v12467 = vpop.f32.mrb[0].mxu0
  %12468 = vmatprep.mubr.f32.mxu0 0.0
  %12469 = vmatmul.mubr.f32.gmra.mrb[0].mxu0 %v12144
  %v12470 = vpop.f32.mrb[0].mxu0
  %v12471 = vadd.f32 0.0, %v12470
  %v12472 = vpop.f32.mrb[0].mxu0
  %12473 = vmatprep.mubr.f32.mxu0 0.0
  %12474 = vmatmul.mubr.f32.gmra.mrb[0].mxu0 %v12147
  %v12475 = vpop.f32.mrb[0].mxu0
  %v12476 = vadd.f32 0.0, %v12475
  %v12477 = vpop.f32.mrb[0].mxu0
  %12478 = vmatprep.mubr.f32.mxu0 0.0
  %12479 = vmatmul.mubr.f32.gmra.mrb[0].mxu0 %v12150
  %v12480 = vpop.f32.mrb[0].mxu0
  %v12481 = vadd.f32 0.0, %v12480
  %v12482 = vpop.f32.mrb[0].mxu0
  %12483 = vmatprep.mubr.f32.mxu0 0.0
  %12484 = vmatmul.mubr.f32.gmra.mrb[0].mxu0 %v12153
  %v12485 = vpop.f32.mrb[0].mxu0
  %v12486 = vadd.f32 0.0, %v12485
  %v12487 = vpop.f32.mrb[0].mxu0
  %12488 = vmatprep.mubr.f32.mxu0 0.0
  %12489 = vmatmul.mubr.f32.gmra.mrb[0].mxu0 %v12156
  %v12490 = vpop.f32.mrb[0].mxu0
  %v12491 = vadd.f32 0.0, %v12490
  %v12492 = vpop.f32.mrb[0].mxu0
  %12493 = vmatprep.mubr.f32.mxu0 0.0
  %12494 = vmatmul.mubr.f32.gmra.mrb[0].mxu0 %v12159
  %v12495 = vpop.f32.mrb[0].mxu0
  %v12496 = vadd.f32 0.0, %v12495
  %v12497 = vpop.f32.mrb[0].mxu0
  %12498 = vmatprep.mubr.f32.mxu0 0.0
  %12499 = vmatmul.mubr.f32.gmra.mrb[0].mxu0 %v12162
  %v12500 = vpop.f32.mrb[0].mxu0
  %v12501 = vadd.f32 0.0, %v12500
  %v12502 = vpop.f32.mrb[0].mxu0
  %12503 = vmatprep.mubr.f32.mxu0 0.0
  %12504 = vmatmul.mubr.f32.gmra.mrb[0].mxu0 %v12165
  %v12505 = vpop.f32.mrb[0].mxu0
  %v12506 = vadd.f32 0.0, %v12505
  %v12507 = vpop.f32.mrb[0].mxu0
  %12508 = vmatprep.mubr.f32.mxu0 0.0
  %12509 = vmatmul.mubr.f32.gmra.mrb[0].mxu0 %v12168
  %v12510 = vpop.f32.mrb[0].mxu0
  %v12511 = vadd.f32 0.0, %v12510
  %v12512 = vpop.f32.mrb[0].mxu0
  %12513 = vmatprep.mubr.f32.mxu0 0.0
  %12514 = vmatmul.mubr.f32.gmra.mrb[0].mxu0 %v12171
  %v12515 = vpop.f32.mrb[0].mxu0
  %v12516 = vadd.f32 0.0, %v12515
  %v12517 = vpop.f32.mrb[0].mxu0
  %12518 = vmatprep.mubr.f32.mxu0 0.0
  %12519 = vmatmul.mubr.f32.gmra.mrb[0].mxu0 %v12174
  %v12520 = vpop.f32.mrb[0].mxu0
  %v12521 = vadd.f32 0.0, %v12520
  %v12522 = vpop.f32.mrb[0].mxu0
  %12523 = vmatprep.mubr.f32.mxu0 0.0
  %12524 = vmatmul.mubr.f32.gmra.mrb[0].mxu0 %v12177
  %v12525 = vpop.f32.mrb[0].mxu0
  %v12526 = vadd.f32 0.0, %v12525
  %v12527 = vpop.f32.mrb[0].mxu0
  %12528 = vmatprep.mubr.f32.mxu0 0.0
  %12529 = vmatmul.mubr.f32.gmra.mrb[0].mxu0 %v12180
  %v12530 = vpop.f32.mrb[0].mxu0
  %v12531 = vadd.f32 0.0, %v12530
  %v12532 = vpop.f32.mrb[0].mxu0
  %12533 = vmatprep.mubr.f32.mxu0 0.0
  %12534 = vmatmul.mubr.f32.gmra.mrb[0].mxu0 %v12183
  %v12535 = vpop.f32.mrb[0].mxu0
  %v12536 = vadd.f32 0.0, %v12535
  %v12537 = vpop.f32.mrb[0].mxu0
  %12538 = vmatprep.mubr.f32.mxu0 0.0
  %12539 = vmatmul.mubr.f32.gmra.mrb[0].mxu0 %v12186
  %v12540 = vpop.f32.mrb[0].mxu0
  %v12541 = vadd.f32 0.0, %v12540
  %v12542 = vpop.f32.mrb[0].mxu0
  %12543 = vmatprep.mubr.f32.mxu0 0.0
  %12544 = vmatmul.mubr.f32.gmra.mrb[0].mxu0 %v12189
  %v12545 = vpop.f32.mrb[0].mxu0
  %v12546 = vadd.f32 0.0, %v12545
  %v12547 = vpop.f32.mrb[0].mxu0
  %12548 = vmatprep.mubr.f32.mxu0 0.0
  %12549 = vmatmul.mubr.f32.gmra.mrb[0].mxu0 %v12192
  %v12550 = vpop.f32.mrb[0].mxu0
  %v12551 = vadd.f32 0.0, %v12550
  %v12552 = vpop.f32.mrb[0].mxu0
  %12553 = vmatprep.mubr.f32.mxu0 0.0
  %12554 = vmatmul.mubr.f32.gmra.mrb[0].mxu0 %v12195
  %v12555 = vpop.f32.mrb[0].mxu0
  %v12556 = vadd.f32 0.0, %v12555
  %v12557 = vpop.f32.mrb[0].mxu0
  %12558 = vmatprep.mubr.f32.mxu0 0.0
  %12559 = vmatmul.mubr.f32.gmra.mrb[0].mxu0 %v12198
  %v12560 = vpop.f32.mrb[0].mxu0
  %v12561 = vadd.f32 0.0, %v12560
  %v12562 = vpop.f32.mrb[0].mxu0
  %12563 = vmatprep.mubr.f32.mxu0 0.0
  %12564 = vmatmul.mubr.f32.gmra.mrb[0].mxu0 %v12201
  %v12565 = vpop.f32.mrb[0].mxu0
  %v12566 = vadd.f32 0.0, %v12565
  %v12567 = vpop.f32.mrb[0].mxu0
  %12568 = vmatprep.mubr.f32.mxu0 0.0
  %12569 = vmatmul.mubr.f32.gmra.mrb[0].mxu0 %v12204
  %v12570 = vpop.f32.mrb[0].mxu0
  %v12571 = vadd.f32 0.0, %v12570
  %v12572 = vpop.f32.mrb[0].mxu0
  %12573 = vmatprep.mubr.f32.mxu0 0.0
  %12574 = vmatmul.mubr.f32.gmra.mrb[0].mxu0 %v12207
  %v12575 = vpop.f32.mrb[0].mxu0
  %v12576 = vadd.f32 0.0, %v12575
  %v12577 = vpop.f32.mrb[0].mxu0
  %12578 = vmatprep.mubr.f32.mxu0 0.0
  %12579 = vmatmul.mubr.f32.gmra.mrb[0].mxu0 %v12210
  %v12580 = vpop.f32.mrb[0].mxu0
  %v12581 = vadd.f32 0.0, %v12580
  %v12582 = vpop.f32.mrb[0].mxu0
  %12583 = vmatprep.mubr.f32.mxu0 0.0
  %12584 = vmatmul.mubr.f32.gmra.mrb[0].mxu0 %v12213
  %v12585 = vpop.f32.mrb[0].mxu0
  %v12586 = vadd.f32 0.0, %v12585
  %v12587 = vpop.f32.mrb[0].mxu0
  %12588 = vmatprep.mubr.f32.mxu0 0.0
  %12589 = vmatmul.mubr.f32.gmra.mrb[0].mxu0 %v12216
  %v12590 = vpop.f32.mrb[0].mxu0
  %v12591 = vadd.f32 0.0, %v12590
  %v12592 = vpop.f32.mrb[0].mxu0
  %12593 = vmatprep.mubr.f32.mxu0 0.0
  %12594 = vmatmul.mubr.f32.gmra.mrb[0].mxu0 %v12219
  %v12595 = vpop.f32.mrb[0].mxu0
  %v12596 = vadd.f32 0.0, %v12595
  %v12597 = vpop.f32.mrb[0].mxu0
  %12598 = vmatprep.mubr.f32.mxu0 0.0
  %12599 = vmatmul.mubr.f32.gmra.mrb[0].mxu0 %v12222
  %v12600 = vpop.f32.mrb[0].mxu0
  %v12601 = vadd.f32 0.0, %v12600
  %v12602 = vpop.f32.mrb[0].mxu0
  %12603 = vmatprep.mubr.f32.mxu0 0.0
  %12604 = vmatmul.mubr.f32.gmra.mrb[0].mxu0 %v12225
  %v12605 = vpop.f32.mrb[0].mxu0
  %v12606 = vadd.f32 0.0, %v12605
  %v12607 = vpop.f32.mrb[0].mxu0
  %12608 = vmatprep.mubr.f32.mxu0 0.0
  %12609 = vmatmul.mubr.f32.gmra.mrb[0].mxu0 %v12228
  %v12610 = vpop.f32.mrb[0].mxu0
  %v12611 = vadd.f32 0.0, %v12610
  %v12612 = vpop.f32.mrb[0].mxu0
  %12613 = vmatprep.mubr.f32.mxu0 0.0
  %12614 = vmatmul.mubr.f32.gmra.mrb[0].mxu0 %v12231
  %v12615 = vpop.f32.mrb[0].mxu0
  %v12616 = vadd.f32 0.0, %v12615
  %v12617 = vpop.f32.mrb[0].mxu0
  %12618 = vmatprep.mubr.f32.mxu0 0.0
  %12619 = vmatmul.mubr.f32.gmra.mrb[0].mxu0 %v12234
  %v12620 = vpop.f32.mrb[0].mxu0
  %v12621 = vadd.f32 0.0, %v12620
  %v12622 = vpop.f32.mrb[0].mxu0
  %12623 = vdwg.mxu0
  %v12624 = vadd.f32 %v11914, %v12306
  %v12625 = vadd.f32 %v11915, %v12311
  %v12626 = vadd.f32 %v11916, %v12316
  %v12627 = vadd.f32 %v11917, %v12321
  %v12628 = vadd.f32 %v11918, %v12326
  %v12629 = vadd.f32 %v11919, %v12331
  %v12630 = vadd.f32 %v11920, %v12336
  %v12631 = vadd.f32 %v11921, %v12341
  %v12632 = vadd.f32 %v11922, %v12346
  %v12633 = vadd.f32 %v11923, %v12351
  %v12634 = vadd.f32 %v11924, %v12356
  %v12635 = vadd.f32 %v11925, %v12361
  %v12636 = vadd.f32 %v11926, %v12366
  %v12637 = vadd.f32 %v11927, %v12371
  %v12638 = vadd.f32 %v11928, %v12376
  %v12639 = vadd.f32 %v11929, %v12381
  %v12640 = vadd.f32 %v11930, %v12386
  %v12641 = vadd.f32 %v11931, %v12391
  %v12642 = vadd.f32 %v11932, %v12396
  %v12643 = vadd.f32 %v11933, %v12401
  %v12644 = vadd.f32 %v11934, %v12406
  %v12645 = vadd.f32 %v11935, %v12411
  %v12646 = vadd.f32 %v11936, %v12416
  %v12647 = vadd.f32 %v11937, %v12421
  %v12648 = vadd.f32 %v11938, %v12426
  %v12649 = vadd.f32 %v11939, %v12431
  %v12650 = vadd.f32 %v11940, %v12436
  %v12651 = vadd.f32 %v11941, %v12441
  %v12652 = vadd.f32 %v11942, %v12446
  %v12653 = vadd.f32 %v11943, %v12451
  %v12654 = vadd.f32 %v11944, %v12456
  %v12655 = vadd.f32 %v11945, %v12461
  %v12656 = vadd.f32 %v11946, %v12466
  %v12657 = vadd.f32 %v11947, %v12471
  %v12658 = vadd.f32 %v11948, %v12476
  %v12659 = vadd.f32 %v11949, %v12481
  %v12660 = vadd.f32 %v11950, %v12486
  %v12661 = vadd.f32 %v11951, %v12491
  %v12662 = vadd.f32 %v11952, %v12496
  %v12663 = vadd.f32 %v11953, %v12501
  %v12664 = vadd.f32 %v11954, %v12506
  %v12665 = vadd.f32 %v11955, %v12511
  %v12666 = vadd.f32 %v11956, %v12516
  %v12667 = vadd.f32 %v11957, %v12521
  %v12668 = vadd.f32 %v11958, %v12526
  %v12669 = vadd.f32 %v11959, %v12531
  %v12670 = vadd.f32 %v11960, %v12536
  %v12671 = vadd.f32 %v11961, %v12541
  %v12672 = vadd.f32 %v11962, %v12546
  %v12673 = vadd.f32 %v11963, %v12551
  %v12674 = vadd.f32 %v11964, %v12556
  %v12675 = vadd.f32 %v11965, %v12561
  %v12676 = vadd.f32 %v11966, %v12566
  %v12677 = vadd.f32 %v11967, %v12571
  %v12678 = vadd.f32 %v11968, %v12576
  %v12679 = vadd.f32 %v11969, %v12581
  %v12680 = vadd.f32 %v11970, %v12586
  %v12681 = vadd.f32 %v11971, %v12591
  %v12682 = vadd.f32 %v11972, %v12596
  %v12683 = vadd.f32 %v11973, %v12601
  %v12684 = vadd.f32 %v11974, %v12606
  %v12685 = vadd.f32 %v11975, %v12611
  %v12686 = vadd.f32 %v11976, %v12616
  %v12687 = vadd.f32 %v11977, %v12621
  %v12688 = vld [vmem:[%s4397 + $0x2] sm:$0xff]
  %v12689 = vld [vmem:[%s4397 + $0xa] sm:$0xff]
  %v12690 = vld [vmem:[%s4397 + $0x1a] sm:$0xff]
  %v12691 = vld [vmem:[%s4397 + $0x22] sm:$0xff]
  %v12692 = vld [vmem:[%s4397 + $0x32] sm:$0xff]
  %v12693 = vld [vmem:[%s4397 + $0x3a] sm:$0xff]
  %v12694 = vld [vmem:[%s4397 + $0x4a] sm:$0xff]
  %v12695 = vld [vmem:[%s4397 + $0x52] sm:$0xff]
  %v12696 = vld [vmem:[%s4397 + $0x62] sm:$0xff]
  %v12697 = vld [vmem:[%s4397 + $0x6a] sm:$0xff]
  %v12698 = vld [vmem:[%s4397 + $0x7a] sm:$0xff]
  %v12699 = vld [vmem:[%s4397 + $0x82] sm:$0xff]
  %v12700 = vld [vmem:[%s4397 + $0x92] sm:$0xff]
  %v12701 = vld [vmem:[%s4397 + $0x9a] sm:$0xff]
  %v12702 = vld [vmem:[%s4397 + $0xaa] sm:$0xff]
  %v12703 = vld [vmem:[%s4397 + $0xb2] sm:$0xff]
  %v12704 = vld [vmem:[%s4397 + $0xc2] sm:$0xff]
  %v12705 = vld [vmem:[%s4397 + $0xca] sm:$0xff]
  %v12706 = vld [vmem:[%s4397 + $0xda] sm:$0xff]
  %v12707 = vld [vmem:[%s4397 + $0xe2] sm:$0xff]
  %v12708 = vld [vmem:[%s4397 + $0xf2] sm:$0xff]
  %v12709 = vld [vmem:[%s4397 + $0xfa] sm:$0xff]
  %v12710 = vld [vmem:[%s4397 + $0x10a] sm:$0xff]
  %v12711 = vld [vmem:[%s4397 + $0x112] sm:$0xff]
  %v12712 = vld [vmem:[%s4397 + $0x122] sm:$0xff]
  %v12713 = vld [vmem:[%s4397 + $0x12a] sm:$0xff]
  %v12714 = vld [vmem:[%s4397 + $0x13a] sm:$0xff]
  %v12715 = vld [vmem:[%s4397 + $0x142] sm:$0xff]
  %v12716 = vld [vmem:[%s4397 + $0x152] sm:$0xff]
  %v12717 = vld [vmem:[%s4397 + $0x15a] sm:$0xff]
  %v12718 = vld [vmem:[%s4397 + $0x16a] sm:$0xff]
  %v12719 = vld [vmem:[%s4397 + $0x172] sm:$0xff]
  %v12720 = vld [vmem:[%s4397 + $0x1b2] sm:$0xff]
  %v12721 = vld [vmem:[%s4397 + $0x1ba] sm:$0xff]
  %v12722 = vld [vmem:[%s4397 + $0x1ca] sm:$0xff]
  %v12723 = vld [vmem:[%s4397 + $0x1d2] sm:$0xff]
  %v12724 = vld [vmem:[%s4397 + $0x1e2] sm:$0xff]
  %v12725 = vld [vmem:[%s4397 + $0x1ea] sm:$0xff]
  %v12726 = vld [vmem:[%s4397 + $0x1fa] sm:$0xff]
  %v12727 = vld [vmem:[%s4397 + $0x202] sm:$0xff]
  %v12728 = vld [vmem:[%s4397 + $0x212] sm:$0xff]
  %v12729 = vld [vmem:[%s4397 + $0x21a] sm:$0xff]
  %v12730 = vld [vmem:[%s4397 + $0x22a] sm:$0xff]
  %v12731 = vld [vmem:[%s4397 + $0x232] sm:$0xff]
  %v12732 = vld [vmem:[%s4397 + $0x242] sm:$0xff]
  %v12733 = vld [vmem:[%s4397 + $0x24a] sm:$0xff]
  %v12734 = vld [vmem:[%s4397 + $0x25a] sm:$0xff]
  %v12735 = vld [vmem:[%s4397 + $0x262] sm:$0xff]
  %v12736 = vld [vmem:[%s4397 + $0x272] sm:$0xff]
  %v12737 = vld [vmem:[%s4397 + $0x27a] sm:$0xff]
  %v12738 = vld [vmem:[%s4397 + $0x28a] sm:$0xff]
  %v12739 = vld [vmem:[%s4397 + $0x292] sm:$0xff]
  %v12740 = vld [vmem:[%s4397 + $0x2a2] sm:$0xff]
  %v12741 = vld [vmem:[%s4397 + $0x2aa] sm:$0xff]
  %v12742 = vld [vmem:[%s4397 + $0x2ba] sm:$0xff]
  %v12743 = vld [vmem:[%s4397 + $0x2c2] sm:$0xff]
  %v12744 = vld [vmem:[%s4397 + $0x2d2] sm:$0xff]
  %v12745 = vld [vmem:[%s4397 + $0x2da] sm:$0xff]
  %v12746 = vld [vmem:[%s4397 + $0x2ea] sm:$0xff]
  %v12747 = vld [vmem:[%s4397 + $0x2f2] sm:$0xff]
  %v12748 = vld [vmem:[%s4397 + $0x302] sm:$0xff]
  %v12749 = vld [vmem:[%s4397 + $0x30a] sm:$0xff]
  %v12750 = vld [vmem:[%s4397 + $0x31a] sm:$0xff]
  %v12751 = vld [vmem:[%s4397 + $0x322] sm:$0xff]
  %s12752 = scalar_lea.vmem %s4, 32
  %v12753 = vld [vmem:[%s12752] sm:$0xf]
  %v12755 = vsel %vm26, %v12688, 0
  %v12758 = vsel %vm26, %v12689, 0
  %v12761 = vsel %vm26, %v12690, 0
  %v12764 = vsel %vm26, %v12691, 0
  %v12767 = vsel %vm26, %v12692, 0
  %v12770 = vsel %vm26, %v12693, 0
  %v12773 = vsel %vm26, %v12694, 0
  %v12776 = vsel %vm26, %v12695, 0
  %v12779 = vsel %vm26, %v12696, 0
  %v12782 = vsel %vm26, %v12697, 0
  %v12785 = vsel %vm26, %v12698, 0
  %v12788 = vsel %vm26, %v12699, 0
  %v12791 = vsel %vm26, %v12700, 0
  %v12794 = vsel %vm26, %v12701, 0
  %v12797 = vsel %vm26, %v12702, 0
  %v12800 = vsel %vm26, %v12703, 0
  %v12803 = vsel %vm26, %v12704, 0
  %v12806 = vsel %vm26, %v12705, 0
  %v12809 = vsel %vm26, %v12706, 0
  %v12812 = vsel %vm26, %v12707, 0
  %v12815 = vsel %vm26, %v12708, 0
  %v12818 = vsel %vm26, %v12709, 0
  %v12821 = vsel %vm26, %v12710, 0
  %v12824 = vsel %vm26, %v12711, 0
  %v12827 = vsel %vm26, %v12712, 0
  %v12830 = vsel %vm26, %v12713, 0
  %v12833 = vsel %vm26, %v12714, 0
  %v12836 = vsel %vm26, %v12715, 0
  %v12839 = vsel %vm26, %v12716, 0
  %v12842 = vsel %vm26, %v12717, 0
  %v12845 = vsel %vm26, %v12718, 0
  %v12848 = vsel %vm26, %v12719, 0
  %v12851 = vsel %vm26, %v12720, 0
  %v12854 = vsel %vm26, %v12721, 0
  %v12857 = vsel %vm26, %v12722, 0
  %v12860 = vsel %vm26, %v12723, 0
  %v12863 = vsel %vm26, %v12724, 0
  %v12866 = vsel %vm26, %v12725, 0
  %v12869 = vsel %vm26, %v12726, 0
  %v12872 = vsel %vm26, %v12727, 0
  %v12875 = vsel %vm26, %v12728, 0
  %v12878 = vsel %vm26, %v12729, 0
  %v12881 = vsel %vm26, %v12730, 0
  %v12884 = vsel %vm26, %v12731, 0
  %v12887 = vsel %vm26, %v12732, 0
  %v12890 = vsel %vm26, %v12733, 0
  %v12893 = vsel %vm26, %v12734, 0
  %v12896 = vsel %vm26, %v12735, 0
  %v12899 = vsel %vm26, %v12736, 0
  %v12902 = vsel %vm26, %v12737, 0
  %v12905 = vsel %vm26, %v12738, 0
  %v12908 = vsel %vm26, %v12739, 0
  %v12911 = vsel %vm26, %v12740, 0
  %v12914 = vsel %vm26, %v12741, 0
  %v12917 = vsel %vm26, %v12742, 0
  %v12920 = vsel %vm26, %v12743, 0
  %v12923 = vsel %vm26, %v12744, 0
  %v12926 = vsel %vm26, %v12745, 0
  %v12929 = vsel %vm26, %v12746, 0
  %v12932 = vsel %vm26, %v12747, 0
  %v12935 = vsel %vm26, %v12748, 0
  %v12938 = vsel %vm26, %v12749, 0
  %v12941 = vsel %vm26, %v12750, 0
  %v12944 = vsel %vm26, %v12751, 0
  %v12947 = vsel %vm588, %v12753, 0
  %12949 = vmatprep.subr.mxu0 0.0
  %12950 = vmatpush1.msra.mxu0 %v12947
  %12951 = vmatprep.subr.mxu0 0.0
  %12952 = vmatpush1.msra.mxu0 0.0
  %12953 = vmatprep.subr.mxu0 0.0
  %12954 = vmatpush1.msra.mxu0 0.0
  %12955 = vmatprep.subr.mxu0 0.0
  %12956 = vmatpush1.msra.mxu0 0.0
  %12957 = vmatprep.subr.mxu0 0.0
  %12958 = vmatpush1.msra.mxu0 0.0
  %12959 = vmatprep.subr.mxu0 0.0
  %12960 = vmatpush1.msra.mxu0 0.0
  %12961 = vmatprep.subr.mxu0 0.0
  %12962 = vmatpush1.msra.mxu0 0.0
  %12963 = vmatprep.subr.mxu0 0.0
  %12964 = vmatpush1.msra.mxu0 0.0
  %12965 = vmatprep.subr.mxu0 0.0
  %12966 = vmatpush1.msra.mxu0 0.0
  %12967 = vmatprep.subr.mxu0 0.0
  %12968 = vmatpush1.msra.mxu0 0.0
  %12969 = vmatprep.subr.mxu0 0.0
  %12970 = vmatpush1.msra.mxu0 0.0
  %12971 = vmatprep.subr.mxu0 0.0
  %12972 = vmatpush1.msra.mxu0 0.0
  %12973 = vmatprep.subr.mxu0 0.0
  %12974 = vmatpush1.msra.mxu0 0.0
  %12975 = vmatprep.subr.mxu0 0.0
  %12976 = vmatpush1.msra.mxu0 0.0
  %12977 = vmatprep.subr.mxu0 0.0
  %12978 = vmatpush1.msra.mxu0 0.0
  %12979 = vmatprep.subr.mxu0 0.0
  %12980 = vmatpush1.msra.mxu0 0.0
  %12981 = vmatprep.subr.mxu0 0.0
  %12982 = vmatpush1.msra.mxu0 0.0
  %12983 = vmatprep.subr.mxu0 0.0
  %12984 = vmatpush1.msra.mxu0 0.0
  %12985 = vmatprep.subr.mxu0 0.0
  %12986 = vmatpush1.msra.mxu0 0.0
  %12987 = vmatprep.subr.mxu0 0.0
  %12988 = vmatpush1.msra.mxu0 0.0
  %12989 = vmatprep.subr.mxu0 0.0
  %12990 = vmatpush1.msra.mxu0 0.0
  %12991 = vmatprep.subr.mxu0 0.0
  %12992 = vmatpush1.msra.mxu0 0.0
  %12993 = vmatprep.subr.mxu0 0.0
  %12994 = vmatpush1.msra.mxu0 0.0
  %12995 = vmatprep.subr.mxu0 0.0
  %12996 = vmatpush1.msra.mxu0 0.0
  %12997 = vmatprep.subr.mxu0 0.0
  %12998 = vmatpush1.msra.mxu0 0.0
  %12999 = vmatprep.subr.mxu0 0.0
  %13000 = vmatpush1.msra.mxu0 0.0
  %13001 = vmatprep.subr.mxu0 0.0
  %13002 = vmatpush1.msra.mxu0 0.0
  %13003 = vmatprep.subr.mxu0 0.0
  %13004 = vmatpush1.msra.mxu0 0.0
  %13005 = vmatprep.subr.mxu0 0.0
  %13006 = vmatpush1.msra.mxu0 0.0
  %13007 = vmatprep.subr.mxu0 0.0
  %13008 = vmatpush1.msra.mxu0 0.0
  %13009 = vmatprep.subr.mxu0 0.0
  %13010 = vmatpush1.msra.mxu0 0.0
  %13011 = vmatprep.subr.mxu0 0.0
  %13012 = vmatpush1.msra.mxu0 0.0
  %13013 = vmatprep.mubr.f32.mxu0 0.0
  %13014 = vmatmul.mubr.f32.gmra.mrb[0].mxu0 %v12755
  %v13015 = vpop.f32.mrb[0].mxu0
  %v13016 = vadd.f32 0.0, %v13015
  %v13017 = vpop.f32.mrb[0].mxu0
  %13018 = vmatprep.mubr.f32.mxu0 0.0
  %13019 = vmatmul.mubr.f32.gmra.mrb[0].mxu0 %v12758
  %v13020 = vpop.f32.mrb[0].mxu0
  %v13021 = vadd.f32 0.0, %v13020
  %v13022 = vpop.f32.mrb[0].mxu0
  %13023 = vmatprep.mubr.f32.mxu0 0.0
  %13024 = vmatmul.mubr.f32.gmra.mrb[0].mxu0 %v12761
  %v13025 = vpop.f32.mrb[0].mxu0
  %v13026 = vadd.f32 0.0, %v13025
  %v13027 = vpop.f32.mrb[0].mxu0
  %13028 = vmatprep.mubr.f32.mxu0 0.0
  %13029 = vmatmul.mubr.f32.gmra.mrb[0].mxu0 %v12764
  %v13030 = vpop.f32.mrb[0].mxu0
  %v13031 = vadd.f32 0.0, %v13030
  %v13032 = vpop.f32.mrb[0].mxu0
  %13033 = vmatprep.mubr.f32.mxu0 0.0
  %13034 = vmatmul.mubr.f32.gmra.mrb[0].mxu0 %v12767
  %v13035 = vpop.f32.mrb[0].mxu0
  %v13036 = vadd.f32 0.0, %v13035
  %v13037 = vpop.f32.mrb[0].mxu0
  %13038 = vmatprep.mubr.f32.mxu0 0.0
  %13039 = vmatmul.mubr.f32.gmra.mrb[0].mxu0 %v12770
  %v13040 = vpop.f32.mrb[0].mxu0
  %v13041 = vadd.f32 0.0, %v13040
  %v13042 = vpop.f32.mrb[0].mxu0
  %13043 = vmatprep.mubr.f32.mxu0 0.0
  %13044 = vmatmul.mubr.f32.gmra.mrb[0].mxu0 %v12773
  %v13045 = vpop.f32.mrb[0].mxu0
  %v13046 = vadd.f32 0.0, %v13045
  %v13047 = vpop.f32.mrb[0].mxu0
  %13048 = vmatprep.mubr.f32.mxu0 0.0
  %13049 = vmatmul.mubr.f32.gmra.mrb[0].mxu0 %v12776
  %v13050 = vpop.f32.mrb[0].mxu0
  %v13051 = vadd.f32 0.0, %v13050
  %v13052 = vpop.f32.mrb[0].mxu0
  %13053 = vmatprep.mubr.f32.mxu0 0.0
  %13054 = vmatmul.mubr.f32.gmra.mrb[0].mxu0 %v12779
  %v13055 = vpop.f32.mrb[0].mxu0
  %v13056 = vadd.f32 0.0, %v13055
  %v13057 = vpop.f32.mrb[0].mxu0
  %13058 = vmatprep.mubr.f32.mxu0 0.0
  %13059 = vmatmul.mubr.f32.gmra.mrb[0].mxu0 %v12782
  %v13060 = vpop.f32.mrb[0].mxu0
  %v13061 = vadd.f32 0.0, %v13060
  %v13062 = vpop.f32.mrb[0].mxu0
  %13063 = vmatprep.mubr.f32.mxu0 0.0
  %13064 = vmatmul.mubr.f32.gmra.mrb[0].mxu0 %v12785
  %v13065 = vpop.f32.mrb[0].mxu0
  %v13066 = vadd.f32 0.0, %v13065
  %v13067 = vpop.f32.mrb[0].mxu0
  %13068 = vmatprep.mubr.f32.mxu0 0.0
  %13069 = vmatmul.mubr.f32.gmra.mrb[0].mxu0 %v12788
  %v13070 = vpop.f32.mrb[0].mxu0
  %v13071 = vadd.f32 0.0, %v13070
  %v13072 = vpop.f32.mrb[0].mxu0
  %13073 = vmatprep.mubr.f32.mxu0 0.0
  %13074 = vmatmul.mubr.f32.gmra.mrb[0].mxu0 %v12791
  %v13075 = vpop.f32.mrb[0].mxu0
  %v13076 = vadd.f32 0.0, %v13075
  %v13077 = vpop.f32.mrb[0].mxu0
  %13078 = vmatprep.mubr.f32.mxu0 0.0
  %13079 = vmatmul.mubr.f32.gmra.mrb[0].mxu0 %v12794
  %v13080 = vpop.f32.mrb[0].mxu0
  %v13081 = vadd.f32 0.0, %v13080
  %v13082 = vpop.f32.mrb[0].mxu0
  %13083 = vmatprep.mubr.f32.mxu0 0.0
  %13084 = vmatmul.mubr.f32.gmra.mrb[0].mxu0 %v12797
  %v13085 = vpop.f32.mrb[0].mxu0
  %v13086 = vadd.f32 0.0, %v13085
  %v13087 = vpop.f32.mrb[0].mxu0
  %13088 = vmatprep.mubr.f32.mxu0 0.0
  %13089 = vmatmul.mubr.f32.gmra.mrb[0].mxu0 %v12800
  %v13090 = vpop.f32.mrb[0].mxu0
  %v13091 = vadd.f32 0.0, %v13090
  %v13092 = vpop.f32.mrb[0].mxu0
  %13093 = vmatprep.mubr.f32.mxu0 0.0
  %13094 = vmatmul.mubr.f32.gmra.mrb[0].mxu0 %v12803
  %v13095 = vpop.f32.mrb[0].mxu0
  %v13096 = vadd.f32 0.0, %v13095
  %v13097 = vpop.f32.mrb[0].mxu0
  %13098 = vmatprep.mubr.f32.mxu0 0.0
  %13099 = vmatmul.mubr.f32.gmra.mrb[0].mxu0 %v12806
  %v13100 = vpop.f32.mrb[0].mxu0
  %v13101 = vadd.f32 0.0, %v13100
  %v13102 = vpop.f32.mrb[0].mxu0
  %13103 = vmatprep.mubr.f32.mxu0 0.0
  %13104 = vmatmul.mubr.f32.gmra.mrb[0].mxu0 %v12809
  %v13105 = vpop.f32.mrb[0].mxu0
  %v13106 = vadd.f32 0.0, %v13105
  %v13107 = vpop.f32.mrb[0].mxu0
  %13108 = vmatprep.mubr.f32.mxu0 0.0
  %13109 = vmatmul.mubr.f32.gmra.mrb[0].mxu0 %v12812
  %v13110 = vpop.f32.mrb[0].mxu0
  %v13111 = vadd.f32 0.0, %v13110
  %v13112 = vpop.f32.mrb[0].mxu0
  %13113 = vmatprep.mubr.f32.mxu0 0.0
  %13114 = vmatmul.mubr.f32.gmra.mrb[0].mxu0 %v12815
  %v13115 = vpop.f32.mrb[0].mxu0
  %v13116 = vadd.f32 0.0, %v13115
  %v13117 = vpop.f32.mrb[0].mxu0
  %13118 = vmatprep.mubr.f32.mxu0 0.0
  %13119 = vmatmul.mubr.f32.gmra.mrb[0].mxu0 %v12818
  %v13120 = vpop.f32.mrb[0].mxu0
  %v13121 = vadd.f32 0.0, %v13120
  %v13122 = vpop.f32.mrb[0].mxu0
  %13123 = vmatprep.mubr.f32.mxu0 0.0
  %13124 = vmatmul.mubr.f32.gmra.mrb[0].mxu0 %v12821
  %v13125 = vpop.f32.mrb[0].mxu0
  %v13126 = vadd.f32 0.0, %v13125
  %v13127 = vpop.f32.mrb[0].mxu0
  %13128 = vmatprep.mubr.f32.mxu0 0.0
  %13129 = vmatmul.mubr.f32.gmra.mrb[0].mxu0 %v12824
  %v13130 = vpop.f32.mrb[0].mxu0
  %v13131 = vadd.f32 0.0, %v13130
  %v13132 = vpop.f32.mrb[0].mxu0
  %13133 = vmatprep.mubr.f32.mxu0 0.0
  %13134 = vmatmul.mubr.f32.gmra.mrb[0].mxu0 %v12827
  %v13135 = vpop.f32.mrb[0].mxu0
  %v13136 = vadd.f32 0.0, %v13135
  %v13137 = vpop.f32.mrb[0].mxu0
  %13138 = vmatprep.mubr.f32.mxu0 0.0
  %13139 = vmatmul.mubr.f32.gmra.mrb[0].mxu0 %v12830
  %v13140 = vpop.f32.mrb[0].mxu0
  %v13141 = vadd.f32 0.0, %v13140
  %v13142 = vpop.f32.mrb[0].mxu0
  %13143 = vmatprep.mubr.f32.mxu0 0.0
  %13144 = vmatmul.mubr.f32.gmra.mrb[0].mxu0 %v12833
  %v13145 = vpop.f32.mrb[0].mxu0
  %v13146 = vadd.f32 0.0, %v13145
  %v13147 = vpop.f32.mrb[0].mxu0
  %13148 = vmatprep.mubr.f32.mxu0 0.0
  %13149 = vmatmul.mubr.f32.gmra.mrb[0].mxu0 %v12836
  %v13150 = vpop.f32.mrb[0].mxu0
  %v13151 = vadd.f32 0.0, %v13150
  %v13152 = vpop.f32.mrb[0].mxu0
  %13153 = vmatprep.mubr.f32.mxu0 0.0
  %13154 = vmatmul.mubr.f32.gmra.mrb[0].mxu0 %v12839
  %v13155 = vpop.f32.mrb[0].mxu0
  %v13156 = vadd.f32 0.0, %v13155
  %v13157 = vpop.f32.mrb[0].mxu0
  %13158 = vmatprep.mubr.f32.mxu0 0.0
  %13159 = vmatmul.mubr.f32.gmra.mrb[0].mxu0 %v12842
  %v13160 = vpop.f32.mrb[0].mxu0
  %v13161 = vadd.f32 0.0, %v13160
  %v13162 = vpop.f32.mrb[0].mxu0
  %13163 = vmatprep.mubr.f32.mxu0 0.0
  %13164 = vmatmul.mubr.f32.gmra.mrb[0].mxu0 %v12845
  %v13165 = vpop.f32.mrb[0].mxu0
  %v13166 = vadd.f32 0.0, %v13165
  %v13167 = vpop.f32.mrb[0].mxu0
  %13168 = vmatprep.mubr.f32.mxu0 0.0
  %13169 = vmatmul.mubr.f32.gmra.mrb[0].mxu0 %v12848
  %v13170 = vpop.f32.mrb[0].mxu0
  %v13171 = vadd.f32 0.0, %v13170
  %v13172 = vpop.f32.mrb[0].mxu0
  %13173 = vmatprep.mubr.f32.mxu0 0.0
  %13174 = vmatmul.mubr.f32.gmra.mrb[0].mxu0 %v12851
  %v13175 = vpop.f32.mrb[0].mxu0
  %v13176 = vadd.f32 0.0, %v13175
  %v13177 = vpop.f32.mrb[0].mxu0
  %13178 = vmatprep.mubr.f32.mxu0 0.0
  %13179 = vmatmul.mubr.f32.gmra.mrb[0].mxu0 %v12854
  %v13180 = vpop.f32.mrb[0].mxu0
  %v13181 = vadd.f32 0.0, %v13180
  %v13182 = vpop.f32.mrb[0].mxu0
  %13183 = vmatprep.mubr.f32.mxu0 0.0
  %13184 = vmatmul.mubr.f32.gmra.mrb[0].mxu0 %v12857
  %v13185 = vpop.f32.mrb[0].mxu0
  %v13186 = vadd.f32 0.0, %v13185
  %v13187 = vpop.f32.mrb[0].mxu0
  %13188 = vmatprep.mubr.f32.mxu0 0.0
  %13189 = vmatmul.mubr.f32.gmra.mrb[0].mxu0 %v12860
  %v13190 = vpop.f32.mrb[0].mxu0
  %v13191 = vadd.f32 0.0, %v13190
  %v13192 = vpop.f32.mrb[0].mxu0
  %13193 = vmatprep.mubr.f32.mxu0 0.0
  %13194 = vmatmul.mubr.f32.gmra.mrb[0].mxu0 %v12863
  %v13195 = vpop.f32.mrb[0].mxu0
  %v13196 = vadd.f32 0.0, %v13195
  %v13197 = vpop.f32.mrb[0].mxu0
  %13198 = vmatprep.mubr.f32.mxu0 0.0
  %13199 = vmatmul.mubr.f32.gmra.mrb[0].mxu0 %v12866
  %v13200 = vpop.f32.mrb[0].mxu0
  %v13201 = vadd.f32 0.0, %v13200
  %v13202 = vpop.f32.mrb[0].mxu0
  %13203 = vmatprep.mubr.f32.mxu0 0.0
  %13204 = vmatmul.mubr.f32.gmra.mrb[0].mxu0 %v12869
  %v13205 = vpop.f32.mrb[0].mxu0
  %v13206 = vadd.f32 0.0, %v13205
  %v13207 = vpop.f32.mrb[0].mxu0
  %13208 = vmatprep.mubr.f32.mxu0 0.0
  %13209 = vmatmul.mubr.f32.gmra.mrb[0].mxu0 %v12872
  %v13210 = vpop.f32.mrb[0].mxu0
  %v13211 = vadd.f32 0.0, %v13210
  %v13212 = vpop.f32.mrb[0].mxu0
  %13213 = vmatprep.mubr.f32.mxu0 0.0
  %13214 = vmatmul.mubr.f32.gmra.mrb[0].mxu0 %v12875
  %v13215 = vpop.f32.mrb[0].mxu0
  %v13216 = vadd.f32 0.0, %v13215
  %v13217 = vpop.f32.mrb[0].mxu0
  %13218 = vmatprep.mubr.f32.mxu0 0.0
  %13219 = vmatmul.mubr.f32.gmra.mrb[0].mxu0 %v12878
  %v13220 = vpop.f32.mrb[0].mxu0
  %v13221 = vadd.f32 0.0, %v13220
  %v13222 = vpop.f32.mrb[0].mxu0
  %13223 = vmatprep.mubr.f32.mxu0 0.0
  %13224 = vmatmul.mubr.f32.gmra.mrb[0].mxu0 %v12881
  %v13225 = vpop.f32.mrb[0].mxu0
  %v13226 = vadd.f32 0.0, %v13225
  %v13227 = vpop.f32.mrb[0].mxu0
  %13228 = vmatprep.mubr.f32.mxu0 0.0
  %13229 = vmatmul.mubr.f32.gmra.mrb[0].mxu0 %v12884
  %v13230 = vpop.f32.mrb[0].mxu0
  %v13231 = vadd.f32 0.0, %v13230
  %v13232 = vpop.f32.mrb[0].mxu0
  %13233 = vmatprep.mubr.f32.mxu0 0.0
  %13234 = vmatmul.mubr.f32.gmra.mrb[0].mxu0 %v12887
  %v13235 = vpop.f32.mrb[0].mxu0
  %v13236 = vadd.f32 0.0, %v13235
  %v13237 = vpop.f32.mrb[0].mxu0
  %13238 = vmatprep.mubr.f32.mxu0 0.0
  %13239 = vmatmul.mubr.f32.gmra.mrb[0].mxu0 %v12890
  %v13240 = vpop.f32.mrb[0].mxu0
  %v13241 = vadd.f32 0.0, %v13240
  %v13242 = vpop.f32.mrb[0].mxu0
  %13243 = vmatprep.mubr.f32.mxu0 0.0
  %13244 = vmatmul.mubr.f32.gmra.mrb[0].mxu0 %v12893
  %v13245 = vpop.f32.mrb[0].mxu0
  %v13246 = vadd.f32 0.0, %v13245
  %v13247 = vpop.f32.mrb[0].mxu0
  %13248 = vmatprep.mubr.f32.mxu0 0.0
  %13249 = vmatmul.mubr.f32.gmra.mrb[0].mxu0 %v12896
  %v13250 = vpop.f32.mrb[0].mxu0
  %v13251 = vadd.f32 0.0, %v13250
  %v13252 = vpop.f32.mrb[0].mxu0
  %13253 = vmatprep.mubr.f32.mxu0 0.0
  %13254 = vmatmul.mubr.f32.gmra.mrb[0].mxu0 %v12899
  %v13255 = vpop.f32.mrb[0].mxu0
  %v13256 = vadd.f32 0.0, %v13255
  %v13257 = vpop.f32.mrb[0].mxu0
  %13258 = vmatprep.mubr.f32.mxu0 0.0
  %13259 = vmatmul.mubr.f32.gmra.mrb[0].mxu0 %v12902
  %v13260 = vpop.f32.mrb[0].mxu0
  %v13261 = vadd.f32 0.0, %v13260
  %v13262 = vpop.f32.mrb[0].mxu0
  %13263 = vmatprep.mubr.f32.mxu0 0.0
  %13264 = vmatmul.mubr.f32.gmra.mrb[0].mxu0 %v12905
  %v13265 = vpop.f32.mrb[0].mxu0
  %v13266 = vadd.f32 0.0, %v13265
  %v13267 = vpop.f32.mrb[0].mxu0
  %13268 = vmatprep.mubr.f32.mxu0 0.0
  %13269 = vmatmul.mubr.f32.gmra.mrb[0].mxu0 %v12908
  %v13270 = vpop.f32.mrb[0].mxu0
  %v13271 = vadd.f32 0.0, %v13270
  %v13272 = vpop.f32.mrb[0].mxu0
  %13273 = vmatprep.mubr.f32.mxu0 0.0
  %13274 = vmatmul.mubr.f32.gmra.mrb[0].mxu0 %v12911
  %v13275 = vpop.f32.mrb[0].mxu0
  %v13276 = vadd.f32 0.0, %v13275
  %v13277 = vpop.f32.mrb[0].mxu0
  %13278 = vmatprep.mubr.f32.mxu0 0.0
  %13279 = vmatmul.mubr.f32.gmra.mrb[0].mxu0 %v12914
  %v13280 = vpop.f32.mrb[0].mxu0
  %v13281 = vadd.f32 0.0, %v13280
  %v13282 = vpop.f32.mrb[0].mxu0
  %13283 = vmatprep.mubr.f32.mxu0 0.0
  %13284 = vmatmul.mubr.f32.gmra.mrb[0].mxu0 %v12917
  %v13285 = vpop.f32.mrb[0].mxu0
  %v13286 = vadd.f32 0.0, %v13285
  %v13287 = vpop.f32.mrb[0].mxu0
  %13288 = vmatprep.mubr.f32.mxu0 0.0
  %13289 = vmatmul.mubr.f32.gmra.mrb[0].mxu0 %v12920
  %v13290 = vpop.f32.mrb[0].mxu0
  %v13291 = vadd.f32 0.0, %v13290
  %v13292 = vpop.f32.mrb[0].mxu0
  %13293 = vmatprep.mubr.f32.mxu0 0.0
  %13294 = vmatmul.mubr.f32.gmra.mrb[0].mxu0 %v12923
  %v13295 = vpop.f32.mrb[0].mxu0
  %v13296 = vadd.f32 0.0, %v13295
  %v13297 = vpop.f32.mrb[0].mxu0
  %13298 = vmatprep.mubr.f32.mxu0 0.0
  %13299 = vmatmul.mubr.f32.gmra.mrb[0].mxu0 %v12926
  %v13300 = vpop.f32.mrb[0].mxu0
  %v13301 = vadd.f32 0.0, %v13300
  %v13302 = vpop.f32.mrb[0].mxu0
  %13303 = vmatprep.mubr.f32.mxu0 0.0
  %13304 = vmatmul.mubr.f32.gmra.mrb[0].mxu0 %v12929
  %v13305 = vpop.f32.mrb[0].mxu0
  %v13306 = vadd.f32 0.0, %v13305
  %v13307 = vpop.f32.mrb[0].mxu0
  %13308 = vmatprep.mubr.f32.mxu0 0.0
  %13309 = vmatmul.mubr.f32.gmra.mrb[0].mxu0 %v12932
  %v13310 = vpop.f32.mrb[0].mxu0
  %v13311 = vadd.f32 0.0, %v13310
  %v13312 = vpop.f32.mrb[0].mxu0
  %13313 = vmatprep.mubr.f32.mxu0 0.0
  %13314 = vmatmul.mubr.f32.gmra.mrb[0].mxu0 %v12935
  %v13315 = vpop.f32.mrb[0].mxu0
  %v13316 = vadd.f32 0.0, %v13315
  %v13317 = vpop.f32.mrb[0].mxu0
  %13318 = vmatprep.mubr.f32.mxu0 0.0
  %13319 = vmatmul.mubr.f32.gmra.mrb[0].mxu0 %v12938
  %v13320 = vpop.f32.mrb[0].mxu0
  %v13321 = vadd.f32 0.0, %v13320
  %v13322 = vpop.f32.mrb[0].mxu0
  %13323 = vmatprep.mubr.f32.mxu0 0.0
  %13324 = vmatmul.mubr.f32.gmra.mrb[0].mxu0 %v12941
  %v13325 = vpop.f32.mrb[0].mxu0
  %v13326 = vadd.f32 0.0, %v13325
  %v13327 = vpop.f32.mrb[0].mxu0
  %13328 = vmatprep.mubr.f32.mxu0 0.0
  %13329 = vmatmul.mubr.f32.gmra.mrb[0].mxu0 %v12944
  %v13330 = vpop.f32.mrb[0].mxu0
  %v13331 = vadd.f32 0.0, %v13330
  %v13332 = vpop.f32.mrb[0].mxu0
  %13333 = vdwg.mxu0
  %v13334 = vadd.f32 %v12624, %v13016
  %v13335 = vadd.f32 %v12625, %v13021
  %v13336 = vadd.f32 %v12626, %v13026
  %v13337 = vadd.f32 %v12627, %v13031
  %v13338 = vadd.f32 %v12628, %v13036
  %v13339 = vadd.f32 %v12629, %v13041
  %v13340 = vadd.f32 %v12630, %v13046
  %v13341 = vadd.f32 %v12631, %v13051
  %v13342 = vadd.f32 %v12632, %v13056
  %v13343 = vadd.f32 %v12633, %v13061
  %v13344 = vadd.f32 %v12634, %v13066
  %v13345 = vadd.f32 %v12635, %v13071
  %v13346 = vadd.f32 %v12636, %v13076
  %v13347 = vadd.f32 %v12637, %v13081
  %v13348 = vadd.f32 %v12638, %v13086
  %v13349 = vadd.f32 %v12639, %v13091
  %v13350 = vadd.f32 %v12640, %v13096
  %v13351 = vadd.f32 %v12641, %v13101
  %v13352 = vadd.f32 %v12642, %v13106
  %v13353 = vadd.f32 %v12643, %v13111
  %v13354 = vadd.f32 %v12644, %v13116
  %v13355 = vadd.f32 %v12645, %v13121
  %v13356 = vadd.f32 %v12646, %v13126
  %v13357 = vadd.f32 %v12647, %v13131
  %v13358 = vadd.f32 %v12648, %v13136
  %v13359 = vadd.f32 %v12649, %v13141
  %v13360 = vadd.f32 %v12650, %v13146
  %v13361 = vadd.f32 %v12651, %v13151
  %v13362 = vadd.f32 %v12652, %v13156
  %v13363 = vadd.f32 %v12653, %v13161
  %v13364 = vadd.f32 %v12654, %v13166
  %v13365 = vadd.f32 %v12655, %v13171
  %v13366 = vadd.f32 %v12656, %v13176
  %v13367 = vadd.f32 %v12657, %v13181
  %v13368 = vadd.f32 %v12658, %v13186
  %v13369 = vadd.f32 %v12659, %v13191
  %v13370 = vadd.f32 %v12660, %v13196
  %v13371 = vadd.f32 %v12661, %v13201
  %v13372 = vadd.f32 %v12662, %v13206
  %v13373 = vadd.f32 %v12663, %v13211
  %v13374 = vadd.f32 %v12664, %v13216
  %v13375 = vadd.f32 %v12665, %v13221
  %v13376 = vadd.f32 %v12666, %v13226
  %v13377 = vadd.f32 %v12667, %v13231
  %v13378 = vadd.f32 %v12668, %v13236
  %v13379 = vadd.f32 %v12669, %v13241
  %v13380 = vadd.f32 %v12670, %v13246
  %v13381 = vadd.f32 %v12671, %v13251
  %v13382 = vadd.f32 %v12672, %v13256
  %v13383 = vadd.f32 %v12673, %v13261
  %v13384 = vadd.f32 %v12674, %v13266
  %v13385 = vadd.f32 %v12675, %v13271
  %v13386 = vadd.f32 %v12676, %v13276
  %v13387 = vadd.f32 %v12677, %v13281
  %v13388 = vadd.f32 %v12678, %v13286
  %v13389 = vadd.f32 %v12679, %v13291
  %v13390 = vadd.f32 %v12680, %v13296
  %v13391 = vadd.f32 %v12681, %v13301
  %v13392 = vadd.f32 %v12682, %v13306
  %v13393 = vadd.f32 %v12683, %v13311
  %v13394 = vadd.f32 %v12684, %v13316
  %v13395 = vadd.f32 %v12685, %v13321
  %v13396 = vadd.f32 %v12686, %v13326
  %v13397 = vadd.f32 %v12687, %v13331
  %v13398 = vld [vmem:[%s5] sm:$0x1]
  %v13399 = vld [vmem:[%s6] sm:$0x1]
  %v13400 = vsel %vm26, %v13334, 0.0
  %v13401 = vsel %vm26, %v13335, 0.0
  %v13402 = vadd.f32 %v13400, %v13401
  %v13403 = vsel %vm26, %v13336, 0.0
  %v13404 = vadd.f32 %v13402, %v13403
  %v13405 = vsel %vm26, %v13337, 0.0
  %v13406 = vadd.f32 %v13404, %v13405
  %v13407 = vsel %vm26, %v13338, 0.0
  %v13408 = vadd.f32 %v13406, %v13407
  %v13409 = vsel %vm26, %v13339, 0.0
  %v13410 = vadd.f32 %v13408, %v13409
  %v13411 = vsel %vm26, %v13340, 0.0
  %v13412 = vadd.f32 %v13410, %v13411
  %v13413 = vsel %vm26, %v13341, 0.0
  %v13414 = vadd.f32 %v13412, %v13413
  %v13415 = vsel %vm26, %v13342, 0.0
  %v13416 = vadd.f32 %v13414, %v13415
  %v13417 = vsel %vm26, %v13343, 0.0
  %v13418 = vadd.f32 %v13416, %v13417
  %v13419 = vsel %vm26, %v13344, 0.0
  %v13420 = vadd.f32 %v13418, %v13419
  %v13421 = vsel %vm26, %v13345, 0.0
  %v13422 = vadd.f32 %v13420, %v13421
  %v13423 = vsel %vm26, %v13346, 0.0
  %v13424 = vadd.f32 %v13422, %v13423
  %v13425 = vsel %vm26, %v13347, 0.0
  %v13426 = vadd.f32 %v13424, %v13425
  %v13427 = vsel %vm26, %v13348, 0.0
  %v13428 = vadd.f32 %v13426, %v13427
  %v13429 = vsel %vm26, %v13349, 0.0
  %v13430 = vadd.f32 %v13428, %v13429
  %v13431 = vsel %vm26, %v13350, 0.0
  %v13432 = vadd.f32 %v13430, %v13431
  %v13433 = vsel %vm26, %v13351, 0.0
  %v13434 = vadd.f32 %v13432, %v13433
  %v13435 = vsel %vm26, %v13352, 0.0
  %v13436 = vadd.f32 %v13434, %v13435
  %v13437 = vsel %vm26, %v13353, 0.0
  %v13438 = vadd.f32 %v13436, %v13437
  %v13439 = vsel %vm26, %v13354, 0.0
  %v13440 = vadd.f32 %v13438, %v13439
  %v13441 = vsel %vm26, %v13355, 0.0
  %v13442 = vadd.f32 %v13440, %v13441
  %v13443 = vsel %vm26, %v13356, 0.0
  %v13444 = vadd.f32 %v13442, %v13443
  %v13445 = vsel %vm26, %v13357, 0.0
  %v13446 = vadd.f32 %v13444, %v13445
  %v13447 = vsel %vm26, %v13358, 0.0
  %v13448 = vadd.f32 %v13446, %v13447
  %v13449 = vsel %vm26, %v13359, 0.0
  %v13450 = vadd.f32 %v13448, %v13449
  %v13451 = vsel %vm26, %v13360, 0.0
  %v13452 = vadd.f32 %v13450, %v13451
  %v13453 = vsel %vm26, %v13361, 0.0
  %v13454 = vadd.f32 %v13452, %v13453
  %v13455 = vsel %vm26, %v13362, 0.0
  %v13456 = vadd.f32 %v13454, %v13455
  %v13457 = vsel %vm26, %v13363, 0.0
  %v13458 = vadd.f32 %v13456, %v13457
  %v13459 = vsel %vm26, %v13364, 0.0
  %v13460 = vadd.f32 %v13458, %v13459
  %v13461 = vsel %vm26, %v13365, 0.0
  %v13462 = vadd.f32 %v13460, %v13461
  %v13463 = vsel %vm26, %v13366, 0.0
  %v13464 = vadd.f32 %v13462, %v13463
  %v13465 = vsel %vm26, %v13367, 0.0
  %v13466 = vadd.f32 %v13464, %v13465
  %v13467 = vsel %vm26, %v13368, 0.0
  %v13468 = vadd.f32 %v13466, %v13467
  %v13469 = vsel %vm26, %v13369, 0.0
  %v13470 = vadd.f32 %v13468, %v13469
  %v13471 = vsel %vm26, %v13370, 0.0
  %v13472 = vadd.f32 %v13470, %v13471
  %v13473 = vsel %vm26, %v13371, 0.0
  %v13474 = vadd.f32 %v13472, %v13473
  %v13475 = vsel %vm26, %v13372, 0.0
  %v13476 = vadd.f32 %v13474, %v13475
  %v13477 = vsel %vm26, %v13373, 0.0
  %v13478 = vadd.f32 %v13476, %v13477
  %v13479 = vsel %vm26, %v13374, 0.0
  %v13480 = vadd.f32 %v13478, %v13479
  %v13481 = vsel %vm26, %v13375, 0.0
  %v13482 = vadd.f32 %v13480, %v13481
  %v13483 = vsel %vm26, %v13376, 0.0
  %v13484 = vadd.f32 %v13482, %v13483
  %v13485 = vsel %vm26, %v13377, 0.0
  %v13486 = vadd.f32 %v13484, %v13485
  %v13487 = vsel %vm26, %v13378, 0.0
  %v13488 = vadd.f32 %v13486, %v13487
  %v13489 = vsel %vm26, %v13379, 0.0
  %v13490 = vadd.f32 %v13488, %v13489
  %v13491 = vsel %vm26, %v13380, 0.0
  %v13492 = vadd.f32 %v13490, %v13491
  %v13493 = vsel %vm26, %v13381, 0.0
  %v13494 = vadd.f32 %v13492, %v13493
  %v13495 = vsel %vm26, %v13382, 0.0
  %v13496 = vadd.f32 %v13494, %v13495
  %v13497 = vsel %vm26, %v13383, 0.0
  %v13498 = vadd.f32 %v13496, %v13497
  %v13499 = vsel %vm26, %v13384, 0.0
  %v13500 = vadd.f32 %v13498, %v13499
  %v13501 = vsel %vm26, %v13385, 0.0
  %v13502 = vadd.f32 %v13500, %v13501
  %v13503 = vsel %vm26, %v13386, 0.0
  %v13504 = vadd.f32 %v13502, %v13503
  %v13505 = vsel %vm26, %v13387, 0.0
  %v13506 = vadd.f32 %v13504, %v13505
  %v13507 = vsel %vm26, %v13388, 0.0
  %v13508 = vadd.f32 %v13506, %v13507
  %v13509 = vsel %vm26, %v13389, 0.0
  %v13510 = vadd.f32 %v13508, %v13509
  %v13511 = vsel %vm26, %v13390, 0.0
  %v13512 = vadd.f32 %v13510, %v13511
  %v13513 = vsel %vm26, %v13391, 0.0
  %v13514 = vadd.f32 %v13512, %v13513
  %v13515 = vsel %vm26, %v13392, 0.0
  %v13516 = vadd.f32 %v13514, %v13515
  %v13517 = vsel %vm26, %v13393, 0.0
  %v13518 = vadd.f32 %v13516, %v13517
  %v13519 = vsel %vm26, %v13394, 0.0
  %v13520 = vadd.f32 %v13518, %v13519
  %v13521 = vsel %vm26, %v13395, 0.0
  %v13522 = vadd.f32 %v13520, %v13521
  %v13523 = vsel %vm26, %v13396, 0.0
  %v13524 = vadd.f32 %v13522, %v13523
  %v13525 = vsel %vm26, %v13397, 0.0
  %v13526 = vadd.f32 %v13524, %v13525
  %v13527 = vrot.slane %v13526, 4
  %v13528 = vadd.f32 %v13526, %v13527
  %v13529 = vrot.slane %v13528, 2
  %v13530 = vadd.f32 %v13528, %v13529
  %v13531 = vrot.slane %v13530, 1
  %v13532 = vadd.f32 %v13530, %v13531
  %v13533 = vmul.f32 %v13334, %v13334
  %v13534 = vmul.f32 %v13335, %v13335
  %v13535 = vmul.f32 %v13336, %v13336
  %v13536 = vmul.f32 %v13337, %v13337
  %v13537 = vmul.f32 %v13338, %v13338
  %v13538 = vmul.f32 %v13339, %v13339
  %v13539 = vmul.f32 %v13340, %v13340
  %v13540 = vmul.f32 %v13341, %v13341
  %v13541 = vmul.f32 %v13342, %v13342
  %v13542 = vmul.f32 %v13343, %v13343
  %v13543 = vmul.f32 %v13344, %v13344
  %v13544 = vmul.f32 %v13345, %v13345
  %v13545 = vmul.f32 %v13346, %v13346
  %v13546 = vmul.f32 %v13347, %v13347
  %v13547 = vmul.f32 %v13348, %v13348
  %v13548 = vmul.f32 %v13349, %v13349
  %v13549 = vmul.f32 %v13350, %v13350
  %v13550 = vmul.f32 %v13351, %v13351
  %v13551 = vmul.f32 %v13352, %v13352
  %v13552 = vmul.f32 %v13353, %v13353
  %v13553 = vmul.f32 %v13354, %v13354
  %v13554 = vmul.f32 %v13355, %v13355
  %v13555 = vmul.f32 %v13356, %v13356
  %v13556 = vmul.f32 %v13357, %v13357
  %v13557 = vmul.f32 %v13358, %v13358
  %v13558 = vmul.f32 %v13359, %v13359
  %v13559 = vmul.f32 %v13360, %v13360
  %v13560 = vmul.f32 %v13361, %v13361
  %v13561 = vmul.f32 %v13362, %v13362
  %v13562 = vmul.f32 %v13363, %v13363
  %v13563 = vmul.f32 %v13364, %v13364
  %v13564 = vmul.f32 %v13365, %v13365
  %v13565 = vmul.f32 %v13366, %v13366
  %v13566 = vmul.f32 %v13367, %v13367
  %v13567 = vmul.f32 %v13368, %v13368
  %v13568 = vmul.f32 %v13369, %v13369
  %v13569 = vmul.f32 %v13370, %v13370
  %v13570 = vmul.f32 %v13371, %v13371
  %v13571 = vmul.f32 %v13372, %v13372
  %v13572 = vmul.f32 %v13373, %v13373
  %v13573 = vmul.f32 %v13374, %v13374
  %v13574 = vmul.f32 %v13375, %v13375
  %v13575 = vmul.f32 %v13376, %v13376
  %v13576 = vmul.f32 %v13377, %v13377
  %v13577 = vmul.f32 %v13378, %v13378
  %v13578 = vmul.f32 %v13379, %v13379
  %v13579 = vmul.f32 %v13380, %v13380
  %v13580 = vmul.f32 %v13381, %v13381
  %v13581 = vmul.f32 %v13382, %v13382
  %v13582 = vmul.f32 %v13383, %v13383
  %v13583 = vmul.f32 %v13384, %v13384
  %v13584 = vmul.f32 %v13385, %v13385
  %v13585 = vmul.f32 %v13386, %v13386
  %v13586 = vmul.f32 %v13387, %v13387
  %v13587 = vmul.f32 %v13388, %v13388
  %v13588 = vmul.f32 %v13389, %v13389
  %v13589 = vmul.f32 %v13390, %v13390
  %v13590 = vmul.f32 %v13391, %v13391
  %v13591 = vmul.f32 %v13392, %v13392
  %v13592 = vmul.f32 %v13393, %v13393
  %v13593 = vmul.f32 %v13394, %v13394
  %v13594 = vmul.f32 %v13395, %v13395
  %v13595 = vmul.f32 %v13396, %v13396
  %v13596 = vmul.f32 %v13397, %v13397
  %v13597 = vsel %vm26, %v13533, 0.0
  %v13598 = vsel %vm26, %v13534, 0.0
  %v13599 = vadd.f32 %v13597, %v13598
  %v13600 = vsel %vm26, %v13535, 0.0
  %v13601 = vadd.f32 %v13599, %v13600
  %v13602 = vsel %vm26, %v13536, 0.0
  %v13603 = vadd.f32 %v13601, %v13602
  %v13604 = vsel %vm26, %v13537, 0.0
  %v13605 = vadd.f32 %v13603, %v13604
  %v13606 = vsel %vm26, %v13538, 0.0
  %v13607 = vadd.f32 %v13605, %v13606
  %v13608 = vsel %vm26, %v13539, 0.0
  %v13609 = vadd.f32 %v13607, %v13608
  %v13610 = vsel %vm26, %v13540, 0.0
  %v13611 = vadd.f32 %v13609, %v13610
  %v13612 = vsel %vm26, %v13541, 0.0
  %v13613 = vadd.f32 %v13611, %v13612
  %v13614 = vsel %vm26, %v13542, 0.0
  %v13615 = vadd.f32 %v13613, %v13614
  %v13616 = vsel %vm26, %v13543, 0.0
  %v13617 = vadd.f32 %v13615, %v13616
  %v13618 = vsel %vm26, %v13544, 0.0
  %v13619 = vadd.f32 %v13617, %v13618
  %v13620 = vsel %vm26, %v13545, 0.0
  %v13621 = vadd.f32 %v13619, %v13620
  %v13622 = vsel %vm26, %v13546, 0.0
  %v13623 = vadd.f32 %v13621, %v13622
  %v13624 = vsel %vm26, %v13547, 0.0
  %v13625 = vadd.f32 %v13623, %v13624
  %v13626 = vsel %vm26, %v13548, 0.0
  %v13627 = vadd.f32 %v13625, %v13626
  %v13628 = vsel %vm26, %v13549, 0.0
  %v13629 = vadd.f32 %v13627, %v13628
  %v13630 = vsel %vm26, %v13550, 0.0
  %v13631 = vadd.f32 %v13629, %v13630
  %v13632 = vsel %vm26, %v13551, 0.0
  %v13633 = vadd.f32 %v13631, %v13632
  %v13634 = vsel %vm26, %v13552, 0.0
  %v13635 = vadd.f32 %v13633, %v13634
  %v13636 = vsel %vm26, %v13553, 0.0
  %v13637 = vadd.f32 %v13635, %v13636
  %v13638 = vsel %vm26, %v13554, 0.0
  %v13639 = vadd.f32 %v13637, %v13638
  %v13640 = vsel %vm26, %v13555, 0.0
  %v13641 = vadd.f32 %v13639, %v13640
  %v13642 = vsel %vm26, %v13556, 0.0
  %v13643 = vadd.f32 %v13641, %v13642
  %v13644 = vsel %vm26, %v13557, 0.0
  %v13645 = vadd.f32 %v13643, %v13644
  %v13646 = vsel %vm26, %v13558, 0.0
  %v13647 = vadd.f32 %v13645, %v13646
  %v13648 = vsel %vm26, %v13559, 0.0
  %v13649 = vadd.f32 %v13647, %v13648
  %v13650 = vsel %vm26, %v13560, 0.0
  %v13651 = vadd.f32 %v13649, %v13650
  %v13652 = vsel %vm26, %v13561, 0.0
  %v13653 = vadd.f32 %v13651, %v13652
  %v13654 = vsel %vm26, %v13562, 0.0
  %v13655 = vadd.f32 %v13653, %v13654
  %v13656 = vsel %vm26, %v13563, 0.0
  %v13657 = vadd.f32 %v13655, %v13656
  %v13658 = vsel %vm26, %v13564, 0.0
  %v13659 = vadd.f32 %v13657, %v13658
  %v13660 = vsel %vm26, %v13565, 0.0
  %v13661 = vadd.f32 %v13659, %v13660
  %v13662 = vsel %vm26, %v13566, 0.0
  %v13663 = vadd.f32 %v13661, %v13662
  %v13664 = vsel %vm26, %v13567, 0.0
  %v13665 = vadd.f32 %v13663, %v13664
  %v13666 = vsel %vm26, %v13568, 0.0
  %v13667 = vadd.f32 %v13665, %v13666
  %v13668 = vsel %vm26, %v13569, 0.0
  %v13669 = vadd.f32 %v13667, %v13668
  %v13670 = vsel %vm26, %v13570, 0.0
  %v13671 = vadd.f32 %v13669, %v13670
  %v13672 = vsel %vm26, %v13571, 0.0
  %v13673 = vadd.f32 %v13671, %v13672
  %v13674 = vsel %vm26, %v13572, 0.0
  %v13675 = vadd.f32 %v13673, %v13674
  %v13676 = vsel %vm26, %v13573, 0.0
  %v13677 = vadd.f32 %v13675, %v13676
  %v13678 = vsel %vm26, %v13574, 0.0
  %v13679 = vadd.f32 %v13677, %v13678
  %v13680 = vsel %vm26, %v13575, 0.0
  %v13681 = vadd.f32 %v13679, %v13680
  %v13682 = vsel %vm26, %v13576, 0.0
  %v13683 = vadd.f32 %v13681, %v13682
  %v13684 = vsel %vm26, %v13577, 0.0
  %v13685 = vadd.f32 %v13683, %v13684
  %v13686 = vsel %vm26, %v13578, 0.0
  %v13687 = vadd.f32 %v13685, %v13686
  %v13688 = vsel %vm26, %v13579, 0.0
  %v13689 = vadd.f32 %v13687, %v13688
  %v13690 = vsel %vm26, %v13580, 0.0
  %v13691 = vadd.f32 %v13689, %v13690
  %v13692 = vsel %vm26, %v13581, 0.0
  %v13693 = vadd.f32 %v13691, %v13692
  %v13694 = vsel %vm26, %v13582, 0.0
  %v13695 = vadd.f32 %v13693, %v13694
  %v13696 = vsel %vm26, %v13583, 0.0
  %v13697 = vadd.f32 %v13695, %v13696
  %v13698 = vsel %vm26, %v13584, 0.0
  %v13699 = vadd.f32 %v13697, %v13698
  %v13700 = vsel %vm26, %v13585, 0.0
  %v13701 = vadd.f32 %v13699, %v13700
  %v13702 = vsel %vm26, %v13586, 0.0
  %v13703 = vadd.f32 %v13701, %v13702
  %v13704 = vsel %vm26, %v13587, 0.0
  %v13705 = vadd.f32 %v13703, %v13704
  %v13706 = vsel %vm26, %v13588, 0.0
  %v13707 = vadd.f32 %v13705, %v13706
  %v13708 = vsel %vm26, %v13589, 0.0
  %v13709 = vadd.f32 %v13707, %v13708
  %v13710 = vsel %vm26, %v13590, 0.0
  %v13711 = vadd.f32 %v13709, %v13710
  %v13712 = vsel %vm26, %v13591, 0.0
  %v13713 = vadd.f32 %v13711, %v13712
  %v13714 = vsel %vm26, %v13592, 0.0
  %v13715 = vadd.f32 %v13713, %v13714
  %v13716 = vsel %vm26, %v13593, 0.0
  %v13717 = vadd.f32 %v13715, %v13716
  %v13718 = vsel %vm26, %v13594, 0.0
  %v13719 = vadd.f32 %v13717, %v13718
  %v13720 = vsel %vm26, %v13595, 0.0
  %v13721 = vadd.f32 %v13719, %v13720
  %v13722 = vsel %vm26, %v13596, 0.0
  %v13723 = vadd.f32 %v13721, %v13722
  %v13724 = vrot.slane %v13723, 4
  %v13725 = vadd.f32 %v13723, %v13724
  %v13726 = vrot.slane %v13725, 2
  %v13727 = vadd.f32 %v13725, %v13726
  %v13728 = vrot.slane %v13727, 1
  %v13729 = vadd.f32 %v13727, %v13728
  %v13730 = vmul.f32 %v13532, 0.001953125
  %v13731 = vmul.f32 %v13729, 0.001953125
  %v13732 = vmul.f32 %v13730, %v13730
  %v13733 = vsub.f32 %v13731, %v13732
  %v13734 = vadd.f32 %v13733, 1e-05
  %v13735 = vrsqrt.pop %v13734
  %v13736 = vmul.f32 %v13398, %v13735
  %v13737 = vmul.f32 %v13730, %v13736
  %v13738 = vsub.f32 %v13399, %v13737
  %v13739 = vld [vmem:[%s0] sm:$0xff]
  %v13740 = vld [vmem:[%s0 + $0x8] sm:$0xff]
  %v13741 = vld [vmem:[%s0 + $0x10] sm:$0xff]
  %v13742 = vld [vmem:[%s0 + $0x18] sm:$0xff]
  %v13743 = vld [vmem:[%s0 + $0x20] sm:$0xff]
  %v13744 = vld [vmem:[%s0 + $0x28] sm:$0xff]
  %v13745 = vld [vmem:[%s0 + $0x30] sm:$0xff]
  %v13746 = vld [vmem:[%s0 + $0x38] sm:$0xff]
  %v13747 = vld [vmem:[%s0 + $0x40] sm:$0xff]
  %v13748 = vld [vmem:[%s0 + $0x48] sm:$0xff]
  %v13749 = vld [vmem:[%s0 + $0x50] sm:$0xff]
  %v13750 = vld [vmem:[%s0 + $0x58] sm:$0xff]
  %v13751 = vld [vmem:[%s0 + $0x60] sm:$0xff]
  %v13752 = vld [vmem:[%s0 + $0x68] sm:$0xff]
  %v13753 = vld [vmem:[%s0 + $0x70] sm:$0xff]
  %v13754 = vld [vmem:[%s0 + $0x78] sm:$0xff]
  %v13755 = vld [vmem:[%s0 + $0x80] sm:$0xff]
  %v13756 = vld [vmem:[%s0 + $0x88] sm:$0xff]
  %v13757 = vld [vmem:[%s0 + $0x90] sm:$0xff]
  %v13758 = vld [vmem:[%s0 + $0x98] sm:$0xff]
  %v13759 = vld [vmem:[%s0 + $0xa0] sm:$0xff]
  %v13760 = vld [vmem:[%s0 + $0xa8] sm:$0xff]
  %v13761 = vld [vmem:[%s0 + $0xb0] sm:$0xff]
  %v13762 = vld [vmem:[%s0 + $0xb8] sm:$0xff]
  %v13763 = vld [vmem:[%s0 + $0xc0] sm:$0xff]
  %v13764 = vld [vmem:[%s0 + $0xc8] sm:$0xff]
  %v13765 = vld [vmem:[%s0 + $0xd0] sm:$0xff]
  %v13766 = vld [vmem:[%s0 + $0xd8] sm:$0xff]
  %v13767 = vld [vmem:[%s0 + $0xe0] sm:$0xff]
  %v13768 = vld [vmem:[%s0 + $0xe8] sm:$0xff]
  %v13769 = vld [vmem:[%s0 + $0xf0] sm:$0xff]
  %v13770 = vld [vmem:[%s0 + $0xf8] sm:$0xff]
  %v13771 = vld [vmem:[%s0 + $0x100] sm:$0xff]
  %v13772 = vld [vmem:[%s0 + $0x108] sm:$0xff]
  %v13773 = vld [vmem:[%s0 + $0x110] sm:$0xff]
  %v13774 = vld [vmem:[%s0 + $0x118] sm:$0xff]
  %v13775 = vld [vmem:[%s0 + $0x120] sm:$0xff]
  %v13776 = vld [vmem:[%s0 + $0x128] sm:$0xff]
  %v13777 = vld [vmem:[%s0 + $0x130] sm:$0xff]
  %v13778 = vld [vmem:[%s0 + $0x138] sm:$0xff]
  %v13779 = vld [vmem:[%s0 + $0x140] sm:$0xff]
  %v13780 = vld [vmem:[%s0 + $0x148] sm:$0xff]
  %v13781 = vld [vmem:[%s0 + $0x150] sm:$0xff]
  %v13782 = vld [vmem:[%s0 + $0x158] sm:$0xff]
  %v13783 = vld [vmem:[%s0 + $0x160] sm:$0xff]
  %v13784 = vld [vmem:[%s0 + $0x168] sm:$0xff]
  %v13785 = vld [vmem:[%s0 + $0x170] sm:$0xff]
  %v13786 = vld [vmem:[%s0 + $0x178] sm:$0xff]
  %v13787 = vld [vmem:[%s0 + $0x180] sm:$0xff]
  %v13788 = vld [vmem:[%s0 + $0x188] sm:$0xff]
  %v13789 = vld [vmem:[%s0 + $0x190] sm:$0xff]
  %v13790 = vld [vmem:[%s0 + $0x198] sm:$0xff]
  %v13791 = vld [vmem:[%s0 + $0x1a0] sm:$0xff]
  %v13792 = vld [vmem:[%s0 + $0x1a8] sm:$0xff]
  %v13793 = vld [vmem:[%s0 + $0x1b0] sm:$0xff]
  %v13794 = vld [vmem:[%s0 + $0x1b8] sm:$0xff]
  %v13795 = vld [vmem:[%s0 + $0x1c0] sm:$0xff]
  %v13796 = vld [vmem:[%s0 + $0x1c8] sm:$0xff]
  %v13797 = vld [vmem:[%s0 + $0x1d0] sm:$0xff]
  %v13798 = vld [vmem:[%s0 + $0x1d8] sm:$0xff]
  %v13799 = vld [vmem:[%s0 + $0x1e0] sm:$0xff]
  %v13800 = vld [vmem:[%s0 + $0x1e8] sm:$0xff]
  %v13801 = vld [vmem:[%s0 + $0x1f0] sm:$0xff]
  %v13802 = vld [vmem:[%s0 + $0x1f8] sm:$0xff]
  %v13804 = vlaneseq
  %v13805 = vshrl.u32 %v13804, 7
  %v13806 = vsub.s32 0, %v13805
  %v13807 = vrot.slane %v13736, %v13806
  %v13809 = vmul.f32 %v13334, %v13807
  %v13810 = vmul.f32 %v13335, %v13807
  %v13811 = vmul.f32 %v13336, %v13807
  %v13812 = vmul.f32 %v13337, %v13807
  %v13813 = vmul.f32 %v13338, %v13807
  %v13814 = vmul.f32 %v13339, %v13807
  %v13815 = vmul.f32 %v13340, %v13807
  %v13816 = vmul.f32 %v13341, %v13807
  %v13817 = vmul.f32 %v13342, %v13807
  %v13818 = vmul.f32 %v13343, %v13807
  %v13819 = vmul.f32 %v13344, %v13807
  %v13820 = vmul.f32 %v13345, %v13807
  %v13821 = vmul.f32 %v13346, %v13807
  %v13822 = vmul.f32 %v13347, %v13807
  %v13823 = vmul.f32 %v13348, %v13807
  %v13824 = vmul.f32 %v13349, %v13807
  %v13825 = vmul.f32 %v13350, %v13807
  %v13826 = vmul.f32 %v13351, %v13807
  %v13827 = vmul.f32 %v13352, %v13807
  %v13828 = vmul.f32 %v13353, %v13807
  %v13829 = vmul.f32 %v13354, %v13807
  %v13830 = vmul.f32 %v13355, %v13807
  %v13831 = vmul.f32 %v13356, %v13807
  %v13832 = vmul.f32 %v13357, %v13807
  %v13833 = vmul.f32 %v13358, %v13807
  %v13834 = vmul.f32 %v13359, %v13807
  %v13835 = vmul.f32 %v13360, %v13807
  %v13836 = vmul.f32 %v13361, %v13807
  %v13837 = vmul.f32 %v13362, %v13807
  %v13838 = vmul.f32 %v13363, %v13807
  %v13839 = vmul.f32 %v13364, %v13807
  %v13840 = vmul.f32 %v13365, %v13807
  %v13841 = vmul.f32 %v13366, %v13807
  %v13842 = vmul.f32 %v13367, %v13807
  %v13843 = vmul.f32 %v13368, %v13807
  %v13844 = vmul.f32 %v13369, %v13807
  %v13845 = vmul.f32 %v13370, %v13807
  %v13846 = vmul.f32 %v13371, %v13807
  %v13847 = vmul.f32 %v13372, %v13807
  %v13848 = vmul.f32 %v13373, %v13807
  %v13849 = vmul.f32 %v13374, %v13807
  %v13850 = vmul.f32 %v13375, %v13807
  %v13851 = vmul.f32 %v13376, %v13807
  %v13852 = vmul.f32 %v13377, %v13807
  %v13853 = vmul.f32 %v13378, %v13807
  %v13854 = vmul.f32 %v13379, %v13807
  %v13855 = vmul.f32 %v13380, %v13807
  %v13856 = vmul.f32 %v13381, %v13807
  %v13857 = vmul.f32 %v13382, %v13807
  %v13858 = vmul.f32 %v13383, %v13807
  %v13859 = vmul.f32 %v13384, %v13807
  %v13860 = vmul.f32 %v13385, %v13807
  %v13861 = vmul.f32 %v13386, %v13807
  %v13862 = vmul.f32 %v13387, %v13807
  %v13863 = vmul.f32 %v13388, %v13807
  %v13864 = vmul.f32 %v13389, %v13807
  %v13865 = vmul.f32 %v13390, %v13807
  %v13866 = vmul.f32 %v13391, %v13807
  %v13867 = vmul.f32 %v13392, %v13807
  %v13868 = vmul.f32 %v13393, %v13807
  %v13869 = vmul.f32 %v13394, %v13807
  %v13870 = vmul.f32 %v13395, %v13807
  %v13871 = vmul.f32 %v13396, %v13807
  %v13872 = vmul.f32 %v13397, %v13807
  %v13874 = vlaneseq
  %v13875 = vshrl.u32 %v13874, 7
  %v13876 = vsub.s32 0, %v13875
  %v13877 = vrot.slane %v13738, %v13876
  %v13879 = vadd.f32 %v13809, %v13877
  %v13880 = vadd.f32 %v13810, %v13877
  %v13881 = vadd.f32 %v13811, %v13877
  %v13882 = vadd.f32 %v13812, %v13877
  %v13883 = vadd.f32 %v13813, %v13877
  %v13884 = vadd.f32 %v13814, %v13877
  %v13885 = vadd.f32 %v13815, %v13877
  %v13886 = vadd.f32 %v13816, %v13877
  %v13887 = vadd.f32 %v13817, %v13877
  %v13888 = vadd.f32 %v13818, %v13877
  %v13889 = vadd.f32 %v13819, %v13877
  %v13890 = vadd.f32 %v13820, %v13877
  %v13891 = vadd.f32 %v13821, %v13877
  %v13892 = vadd.f32 %v13822, %v13877
  %v13893 = vadd.f32 %v13823, %v13877
  %v13894 = vadd.f32 %v13824, %v13877
  %v13895 = vadd.f32 %v13825, %v13877
  %v13896 = vadd.f32 %v13826, %v13877
  %v13897 = vadd.f32 %v13827, %v13877
  %v13898 = vadd.f32 %v13828, %v13877
  %v13899 = vadd.f32 %v13829, %v13877
  %v13900 = vadd.f32 %v13830, %v13877
  %v13901 = vadd.f32 %v13831, %v13877
  %v13902 = vadd.f32 %v13832, %v13877
  %v13903 = vadd.f32 %v13833, %v13877
  %v13904 = vadd.f32 %v13834, %v13877
  %v13905 = vadd.f32 %v13835, %v13877
  %v13906 = vadd.f32 %v13836, %v13877
  %v13907 = vadd.f32 %v13837, %v13877
  %v13908 = vadd.f32 %v13838, %v13877
  %v13909 = vadd.f32 %v13839, %v13877
  %v13910 = vadd.f32 %v13840, %v13877
  %v13911 = vadd.f32 %v13841, %v13877
  %v13912 = vadd.f32 %v13842, %v13877
  %v13913 = vadd.f32 %v13843, %v13877
  %v13914 = vadd.f32 %v13844, %v13877
  %v13915 = vadd.f32 %v13845, %v13877
  %v13916 = vadd.f32 %v13846, %v13877
  %v13917 = vadd.f32 %v13847, %v13877
  %v13918 = vadd.f32 %v13848, %v13877
  %v13919 = vadd.f32 %v13849, %v13877
  %v13920 = vadd.f32 %v13850, %v13877
  %v13921 = vadd.f32 %v13851, %v13877
  %v13922 = vadd.f32 %v13852, %v13877
  %v13923 = vadd.f32 %v13853, %v13877
  %v13924 = vadd.f32 %v13854, %v13877
  %v13925 = vadd.f32 %v13855, %v13877
  %v13926 = vadd.f32 %v13856, %v13877
  %v13927 = vadd.f32 %v13857, %v13877
  %v13928 = vadd.f32 %v13858, %v13877
  %v13929 = vadd.f32 %v13859, %v13877
  %v13930 = vadd.f32 %v13860, %v13877
  %v13931 = vadd.f32 %v13861, %v13877
  %v13932 = vadd.f32 %v13862, %v13877
  %v13933 = vadd.f32 %v13863, %v13877
  %v13934 = vadd.f32 %v13864, %v13877
  %v13935 = vadd.f32 %v13865, %v13877
  %v13936 = vadd.f32 %v13866, %v13877
  %v13937 = vadd.f32 %v13867, %v13877
  %v13938 = vadd.f32 %v13868, %v13877
  %v13939 = vadd.f32 %v13869, %v13877
  %v13940 = vadd.f32 %v13870, %v13877
  %v13941 = vadd.f32 %v13871, %v13877
  %v13942 = vadd.f32 %v13872, %v13877
  %v13943 = vadd.f32 %v13879, %v13739
  %v13944 = vadd.f32 %v13880, %v13740
  %v13945 = vadd.f32 %v13881, %v13741
  %v13946 = vadd.f32 %v13882, %v13742
  %v13947 = vadd.f32 %v13883, %v13743
  %v13948 = vadd.f32 %v13884, %v13744
  %v13949 = vadd.f32 %v13885, %v13745
  %v13950 = vadd.f32 %v13886, %v13746
  %v13951 = vadd.f32 %v13887, %v13747
  %v13952 = vadd.f32 %v13888, %v13748
  %v13953 = vadd.f32 %v13889, %v13749
  %v13954 = vadd.f32 %v13890, %v13750
  %v13955 = vadd.f32 %v13891, %v13751
  %v13956 = vadd.f32 %v13892, %v13752
  %v13957 = vadd.f32 %v13893, %v13753
  %v13958 = vadd.f32 %v13894, %v13754
  %v13959 = vadd.f32 %v13895, %v13755
  %v13960 = vadd.f32 %v13896, %v13756
  %v13961 = vadd.f32 %v13897, %v13757
  %v13962 = vadd.f32 %v13898, %v13758
  %v13963 = vadd.f32 %v13899, %v13759
  %v13964 = vadd.f32 %v13900, %v13760
  %v13965 = vadd.f32 %v13901, %v13761
  %v13966 = vadd.f32 %v13902, %v13762
  %v13967 = vadd.f32 %v13903, %v13763
  %v13968 = vadd.f32 %v13904, %v13764
  %v13969 = vadd.f32 %v13905, %v13765
  %v13970 = vadd.f32 %v13906, %v13766
  %v13971 = vadd.f32 %v13907, %v13767
  %v13972 = vadd.f32 %v13908, %v13768
  %v13973 = vadd.f32 %v13909, %v13769
  %v13974 = vadd.f32 %v13910, %v13770
  %v13975 = vadd.f32 %v13911, %v13771
  %v13976 = vadd.f32 %v13912, %v13772
  %v13977 = vadd.f32 %v13913, %v13773
  %v13978 = vadd.f32 %v13914, %v13774
  %v13979 = vadd.f32 %v13915, %v13775
  %v13980 = vadd.f32 %v13916, %v13776
  %v13981 = vadd.f32 %v13917, %v13777
  %v13982 = vadd.f32 %v13918, %v13778
  %v13983 = vadd.f32 %v13919, %v13779
  %v13984 = vadd.f32 %v13920, %v13780
  %v13985 = vadd.f32 %v13921, %v13781
  %v13986 = vadd.f32 %v13922, %v13782
  %v13987 = vadd.f32 %v13923, %v13783
  %v13988 = vadd.f32 %v13924, %v13784
  %v13989 = vadd.f32 %v13925, %v13785
  %v13990 = vadd.f32 %v13926, %v13786
  %v13991 = vadd.f32 %v13927, %v13787
  %v13992 = vadd.f32 %v13928, %v13788
  %v13993 = vadd.f32 %v13929, %v13789
  %v13994 = vadd.f32 %v13930, %v13790
  %v13995 = vadd.f32 %v13931, %v13791
  %v13996 = vadd.f32 %v13932, %v13792
  %v13997 = vadd.f32 %v13933, %v13793
  %v13998 = vadd.f32 %v13934, %v13794
  %v13999 = vadd.f32 %v13935, %v13795
  %v14000 = vadd.f32 %v13936, %v13796
  %v14001 = vadd.f32 %v13937, %v13797
  %v14002 = vadd.f32 %v13938, %v13798
  %v14003 = vadd.f32 %v13939, %v13799
  %v14004 = vadd.f32 %v13940, %v13800
  %v14005 = vadd.f32 %v13941, %v13801
  %v14006 = vadd.f32 %v13942, %v13802
  %v14007 = vmax.f32 %v13943, 0.0
  %v14008 = vmax.f32 %v13944, 0.0
  %v14009 = vmax.f32 %v13945, 0.0
  %v14010 = vmax.f32 %v13946, 0.0
  %v14011 = vmax.f32 %v13947, 0.0
  %v14012 = vmax.f32 %v13948, 0.0
  %v14013 = vmax.f32 %v13949, 0.0
  %v14014 = vmax.f32 %v13950, 0.0
  %v14015 = vmax.f32 %v13951, 0.0
  %v14016 = vmax.f32 %v13952, 0.0
  %v14017 = vmax.f32 %v13953, 0.0
  %v14018 = vmax.f32 %v13954, 0.0
  %v14019 = vmax.f32 %v13955, 0.0
  %v14020 = vmax.f32 %v13956, 0.0
  %v14021 = vmax.f32 %v13957, 0.0
  %v14022 = vmax.f32 %v13958, 0.0
  %v14023 = vmax.f32 %v13959, 0.0
  %v14024 = vmax.f32 %v13960, 0.0
  %v14025 = vmax.f32 %v13961, 0.0
  %v14026 = vmax.f32 %v13962, 0.0
  %v14027 = vmax.f32 %v13963, 0.0
  %v14028 = vmax.f32 %v13964, 0.0
  %v14029 = vmax.f32 %v13965, 0.0
  %v14030 = vmax.f32 %v13966, 0.0
  %v14031 = vmax.f32 %v13967, 0.0
  %v14032 = vmax.f32 %v13968, 0.0
  %v14033 = vmax.f32 %v13969, 0.0
  %v14034 = vmax.f32 %v13970, 0.0
  %v14035 = vmax.f32 %v13971, 0.0
  %v14036 = vmax.f32 %v13972, 0.0
  %v14037 = vmax.f32 %v13973, 0.0
  %v14038 = vmax.f32 %v13974, 0.0
  %v14039 = vmax.f32 %v13975, 0.0
  %v14040 = vmax.f32 %v13976, 0.0
  %v14041 = vmax.f32 %v13977, 0.0
  %v14042 = vmax.f32 %v13978, 0.0
  %v14043 = vmax.f32 %v13979, 0.0
  %v14044 = vmax.f32 %v13980, 0.0
  %v14045 = vmax.f32 %v13981, 0.0
  %v14046 = vmax.f32 %v13982, 0.0
  %v14047 = vmax.f32 %v13983, 0.0
  %v14048 = vmax.f32 %v13984, 0.0
  %v14049 = vmax.f32 %v13985, 0.0
  %v14050 = vmax.f32 %v13986, 0.0
  %v14051 = vmax.f32 %v13987, 0.0
  %v14052 = vmax.f32 %v13988, 0.0
  %v14053 = vmax.f32 %v13989, 0.0
  %v14054 = vmax.f32 %v13990, 0.0
  %v14055 = vmax.f32 %v13991, 0.0
  %v14056 = vmax.f32 %v13992, 0.0
  %v14057 = vmax.f32 %v13993, 0.0
  %v14058 = vmax.f32 %v13994, 0.0
  %v14059 = vmax.f32 %v13995, 0.0
  %v14060 = vmax.f32 %v13996, 0.0
  %v14061 = vmax.f32 %v13997, 0.0
  %v14062 = vmax.f32 %v13998, 0.0
  %v14063 = vmax.f32 %v13999, 0.0
  %v14064 = vmax.f32 %v14000, 0.0
  %v14065 = vmax.f32 %v14001, 0.0
  %v14066 = vmax.f32 %v14002, 0.0
  %v14067 = vmax.f32 %v14003, 0.0
  %v14068 = vmax.f32 %v14004, 0.0
  %v14069 = vmax.f32 %v14005, 0.0
  %v14070 = vmax.f32 %v14006, 0.0
  %14071 = vst.msk [vmem:[%s7] sm:$0xff] %vm26, %v14007
  %14072 = vst.msk [vmem:[%s7 + $0x8] sm:$0xff] %vm26, %v14008
  %14073 = vst.msk [vmem:[%s7 + $0x10] sm:$0xff] %vm26, %v14009
  %14074 = vst.msk [vmem:[%s7 + $0x18] sm:$0xff] %vm26, %v14010
  %14075 = vst.msk [vmem:[%s7 + $0x20] sm:$0xff] %vm26, %v14011
  %14076 = vst.msk [vmem:[%s7 + $0x28] sm:$0xff] %vm26, %v14012
  %14077 = vst.msk [vmem:[%s7 + $0x30] sm:$0xff] %vm26, %v14013
  %14078 = vst.msk [vmem:[%s7 + $0x38] sm:$0xff] %vm26, %v14014
  %14079 = vst.msk [vmem:[%s7 + $0x40] sm:$0xff] %vm26, %v14015
  %14080 = vst.msk [vmem:[%s7 + $0x48] sm:$0xff] %vm26, %v14016
  %14081 = vst.msk [vmem:[%s7 + $0x50] sm:$0xff] %vm26, %v14017
  %14082 = vst.msk [vmem:[%s7 + $0x58] sm:$0xff] %vm26, %v14018
  %14083 = vst.msk [vmem:[%s7 + $0x60] sm:$0xff] %vm26, %v14019
  %14084 = vst.msk [vmem:[%s7 + $0x68] sm:$0xff] %vm26, %v14020
  %14085 = vst.msk [vmem:[%s7 + $0x70] sm:$0xff] %vm26, %v14021
  %14086 = vst.msk [vmem:[%s7 + $0x78] sm:$0xff] %vm26, %v14022
  %14087 = vst.msk [vmem:[%s7 + $0x80] sm:$0xff] %vm26, %v14023
  %14088 = vst.msk [vmem:[%s7 + $0x88] sm:$0xff] %vm26, %v14024
  %14089 = vst.msk [vmem:[%s7 + $0x90] sm:$0xff] %vm26, %v14025
  %14090 = vst.msk [vmem:[%s7 + $0x98] sm:$0xff] %vm26, %v14026
  %14091 = vst.msk [vmem:[%s7 + $0xa0] sm:$0xff] %vm26, %v14027
  %14092 = vst.msk [vmem:[%s7 + $0xa8] sm:$0xff] %vm26, %v14028
  %14093 = vst.msk [vmem:[%s7 + $0xb0] sm:$0xff] %vm26, %v14029
  %14094 = vst.msk [vmem:[%s7 + $0xb8] sm:$0xff] %vm26, %v14030
  %14095 = vst.msk [vmem:[%s7 + $0xc0] sm:$0xff] %vm26, %v14031
  %14096 = vst.msk [vmem:[%s7 + $0xc8] sm:$0xff] %vm26, %v14032
  %14097 = vst.msk [vmem:[%s7 + $0xd0] sm:$0xff] %vm26, %v14033
  %14098 = vst.msk [vmem:[%s7 + $0xd8] sm:$0xff] %vm26, %v14034
  %14099 = vst.msk [vmem:[%s7 + $0xe0] sm:$0xff] %vm26, %v14035
  %14100 = vst.msk [vmem:[%s7 + $0xe8] sm:$0xff] %vm26, %v14036
  %14101 = vst.msk [vmem:[%s7 + $0xf0] sm:$0xff] %vm26, %v14037
  %14102 = vst.msk [vmem:[%s7 + $0xf8] sm:$0xff] %vm26, %v14038
  %14103 = vst.msk [vmem:[%s7 + $0x100] sm:$0xff] %vm26, %v14039
  %14104 = vst.msk [vmem:[%s7 + $0x108] sm:$0xff] %vm26, %v14040
  %14105 = vst.msk [vmem:[%s7 + $0x110] sm:$0xff] %vm26, %v14041
  %14106 = vst.msk [vmem:[%s7 + $0x118] sm:$0xff] %vm26, %v14042
  %14107 = vst.msk [vmem:[%s7 + $0x120] sm:$0xff] %vm26, %v14043
  %14108 = vst.msk [vmem:[%s7 + $0x128] sm:$0xff] %vm26, %v14044
  %14109 = vst.msk [vmem:[%s7 + $0x130] sm:$0xff] %vm26, %v14045
  %14110 = vst.msk [vmem:[%s7 + $0x138] sm:$0xff] %vm26, %v14046
  %14111 = vst.msk [vmem:[%s7 + $0x140] sm:$0xff] %vm26, %v14047
  %14112 = vst.msk [vmem:[%s7 + $0x148] sm:$0xff] %vm26, %v14048
  %14113 = vst.msk [vmem:[%s7 + $0x150] sm:$0xff] %vm26, %v14049
  %14114 = vst.msk [vmem:[%s7 + $0x158] sm:$0xff] %vm26, %v14050
  %14115 = vst.msk [vmem:[%s7 + $0x160] sm:$0xff] %vm26, %v14051
  %14116 = vst.msk [vmem:[%s7 + $0x168] sm:$0xff] %vm26, %v14052
  %14117 = vst.msk [vmem:[%s7 + $0x170] sm:$0xff] %vm26, %v14053
  %14118 = vst.msk [vmem:[%s7 + $0x178] sm:$0xff] %vm26, %v14054
  %14119 = vst.msk [vmem:[%s7 + $0x180] sm:$0xff] %vm26, %v14055
  %14120 = vst.msk [vmem:[%s7 + $0x188] sm:$0xff] %vm26, %v14056
  %14121 = vst.msk [vmem:[%s7 + $0x190] sm:$0xff] %vm26, %v14057
  %14122 = vst.msk [vmem:[%s7 + $0x198] sm:$0xff] %vm26, %v14058
  %14123 = vst.msk [vmem:[%s7 + $0x1a0] sm:$0xff] %vm26, %v14059
  %14124 = vst.msk [vmem:[%s7 + $0x1a8] sm:$0xff] %vm26, %v14060
  %14125 = vst.msk [vmem:[%s7 + $0x1b0] sm:$0xff] %vm26, %v14061
  %14126 = vst.msk [vmem:[%s7 + $0x1b8] sm:$0xff] %vm26, %v14062
  %14127 = vst.msk [vmem:[%s7 + $0x1c0] sm:$0xff] %vm26, %v14063
  %14128 = vst.msk [vmem:[%s7 + $0x1c8] sm:$0xff] %vm26, %v14064
  %14129 = vst.msk [vmem:[%s7 + $0x1d0] sm:$0xff] %vm26, %v14065
  %14130 = vst.msk [vmem:[%s7 + $0x1d8] sm:$0xff] %vm26, %v14066
  %14131 = vst.msk [vmem:[%s7 + $0x1e0] sm:$0xff] %vm26, %v14067
  %14132 = vst.msk [vmem:[%s7 + $0x1e8] sm:$0xff] %vm26, %v14068
  %14133 = vst.msk [vmem:[%s7 + $0x1f0] sm:$0xff] %vm26, %v14069
  %14134 = vst.msk [vmem:[%s7 + $0x1f8] sm:$0xff] %vm26, %v14070
  // Predicated region
  $region30: #{tpu_custom_call.1} parent=0 // pred_check
    _
  $region31: #{tpu_custom_call.1} parent=0 // pred_check_branch
    %14136 = sbr.rel (0) target = $region33
  $region32: #{tpu_custom_call.1} parent=0 // pred_region
    _
  $region33: #{tpu_custom_call.1} parent=0 // pred_fallthru
    _
  // Predicated region
  $region34: #{tpu_custom_call.1} parent=0 // pred_check
    _
  $region35: #{tpu_custom_call.1} parent=0 // pred_check_branch
    %14138 = sbr.rel (0) target = $region37
  $region36: #{tpu_custom_call.1} parent=0 // pred_region
    _
  $region37: #{tpu_custom_call.1} parent=0 // pred_fallthru
    _

</llo_original>
